<compile_context>
chip_gen: v6e
topology: v6e:2x2x1
jax: 0.10.0
libtpu: 0.0.40
codegen_flags: <defaults>
</compile_context>

<pallas_src>
import jax
import jax.numpy as jnp
from jax.experimental import pallas as pl
from jax.experimental.pallas import tpu as pltpu


def _round_up(x, m):
    return (x + m - 1) // m * m


def sam_rpn_bbox_quality_loss(roi_feats, w1, w2, w3, labels):
    """roi_feats: [N, Cin, P, P] (RoIAlign output, NCHW, f32).
    w1: [hid, Cin, 3, 3], w2: [hid//2, hid, P, P], w3: [C, hid//2, 1, 1] (torch OIHW).
    labels: [N] int32.  Returns (logits [N, C] f32, scalar CE loss)."""
    N, Cin, P, _ = roi_feats.shape
    hid = w1.shape[0]
    oc2 = w2.shape[0]
    C = w3.shape[0]

    Pp = P + 2                                    # padded spatial side (3x3, pad=1)
    l0 = Pp + 1                                   # flat padded index of interior (0,0)
    Sc = _round_up(Pp * (P - 1) + P, 8)           # contiguous span holding all interiors
    # tap t = ky*3+kx starts its shifted window at l0 + (ky-1)*Pp + (kx-1)
    starts = tuple(l0 + (ky - 1) * Pp + (kx - 1)
                   for ky in range(3) for kx in range(3))
    Lp = _round_up(max(Pp * Pp, max(starts) + Sc), 8)   # every tap slice stays in-bounds

    # ROI tile: multiple of 16 (bf16 sublanes), capped at 128 (fits default VMEM
    # comfortably on all generations, incl. v7x's 64 MiB).
    tile = min(_round_up(N, 16), 128)
    n_pad = _round_up(N, tile)
    n_tiles = n_pad // tile

    # ---- wrapper: layout work only on the *raw* features (no 9x inflation) ----
    xp = jnp.pad(roi_feats, ((0, 0), (0, 0), (1, 1), (1, 1)))        # [N,Cin,Pp,Pp]
    xp = xp.transpose(2, 3, 0, 1).reshape(Pp * Pp, N, Cin)           # [L, N, Cin]
    xp = jnp.pad(xp, ((0, Lp - Pp * Pp), (0, n_pad - N), (0, 0)))
    xp = xp.astype(jnp.bfloat16)                                     # [Lp, n_pad, Cin]

    # Conv1 weights: one [Cin, hid] block per 3x3 tap (t = ky*3+kx).
    w1m = jnp.transpose(w1, (2, 3, 1, 0)).reshape(9, Cin, hid).astype(jnp.bfloat16)
    # Conv2 (PxP) weights: one [hid, oc2] block per interior position (k = y*P+x).
    w2m = jnp.transpose(w2, (2, 3, 1, 0)).reshape(P * P, hid, oc2).astype(jnp.bfloat16)
    # Conv3 (1x1) weights, kept f32 (tiny dot; preserves h2's f32 accumulation).
    w3m = w3[:, :, 0, 0].T.astype(jnp.float32)                       # [oc2, C]

    lbl = jnp.pad(labels.astype(jnp.int32), (0, n_pad - N)).reshape(n_pad, 1)

    def kernel(x_ref, w1_ref, w2_ref, w3_ref, lbl_ref, logits_ref, ce_ref):
        # --- Conv2d(Cin, hid, 3x3, pad=1) + ReLU: 9 shifted big matmuls -------
        # Each tap is a static slice of the leading (flattened, zero-padded)
        # spatial axis; leading-dim merge (Sc, tile) -> Sc*tile is layout-free.
        h1 = None
        for t in range(9):
            s0 = starts[t]
            lhs = x_ref[s0:s0 + Sc, :, :].reshape(Sc * tile, Cin)
            part = jnp.dot(lhs, w1_ref[t], preferred_element_type=jnp.float32)
            h1 = part if h1 is None else h1 + part
        h1 = jnp.maximum(h1, 0.0).astype(jnp.bfloat16)               # ReLU
        h1 = h1.reshape(Sc, tile, hid)                               # free split

        # --- Conv2d(hid, oc2, PxP) + ReLU: P*P accumulated dots (K = hid) -----
        # Only interior rows of h1 are read; halo garbage rows are never touched.
        h2 = None
        for k in range(P * P):
            s = (k // P) * Pp + (k % P)
            part = jnp.dot(h1[s], w2_ref[k], preferred_element_type=jnp.float32)
            h2 = part if h2 is None else h2 + part
        h2 = jnp.maximum(h2, 0.0)                                    # ReLU, stays f32

        # --- Conv2d(oc2, C, 1x1) + Flatten (all-f32, tiny) --------------------
        q = jnp.dot(h2, w3_ref[...], preferred_element_type=jnp.float32)  # [tile, C]
        logits_ref[...] = q

        # --- per-ROI cross-entropy terms (padded ROI rows masked to 0) --------
        m = jnp.max(q, axis=-1, keepdims=True)
        lse = m + jnp.log(jnp.sum(jnp.exp(q - m), axis=-1, keepdims=True))
        col = jax.lax.broadcasted_iota(jnp.int32, (tile, C), 1)
        picked = jnp.sum(jnp.where(col == lbl_ref[...], q, 0.0),
                         axis=-1, keepdims=True)
        row = (pl.program_id(0) * tile
               + jax.lax.broadcasted_iota(jnp.int32, (tile, 1), 0))
        ce_ref[...] = jnp.where(row < N, lse - picked, 0.0)

    grid_spec = pltpu.PrefetchScalarGridSpec(
        num_scalar_prefetch=0,
        grid=(n_tiles,),
        in_specs=[
            pl.BlockSpec((Lp, tile, Cin), lambda i: (0, i, 0)),      # ROI tile of features
            pl.BlockSpec((9, Cin, hid), lambda i: (0, 0, 0)),        # resident weights
            pl.BlockSpec((P * P, hid, oc2), lambda i: (0, 0, 0)),
            pl.BlockSpec((oc2, C), lambda i: (0, 0)),
            pl.BlockSpec((tile, 1), lambda i: (i, 0)),               # int32 labels
        ],
        out_specs=[
            pl.BlockSpec((tile, C), lambda i: (i, 0)),               # logits
            pl.BlockSpec((tile, 1), lambda i: (i, 0)),               # masked CE terms
        ],
    )

    logits_pad, ce_pad = pl.pallas_call(
        kernel,
        out_shape=(jax.ShapeDtypeStruct((n_pad, C), jnp.float32),
                   jax.ShapeDtypeStruct((n_pad, 1), jnp.float32)),
        grid_spec=grid_spec,
        # ROI-tile axis is independent across steps (padded rows masked
        # in-kernel) -> "parallel"; shardable across v7x's two TensorCores.
        compiler_params=pltpu.CompilerParams(dimension_semantics=("parallel",)),
    )(xp, w1m, w2m, w3m, lbl)

    logits = logits_pad[:N]
    loss = jnp.sum(ce_pad) / N
    return logits, loss


def _ref_forward(roi_feats, w1, w2, w3, labels):
    """Pure-JAX reference of SamRPN.bbox_quality + F.cross_entropy."""
    dn = ("NCHW", "OIHW", "NCHW")
    h = jax.lax.conv_general_dilated(roi_feats, w1, (1, 1), [(1, 1), (1, 1)],
                                     dimension_numbers=dn)
    h = jnp.maximum(h, 0.0)
    h = jax.lax.conv_general_dilated(h, w2, (1, 1), "VALID", dimension_numbers=dn)
    h = jnp.maximum(h, 0.0)
    h = jax.lax.conv_general_dilated(h, w3, (1, 1), "VALID", dimension_numbers=dn)
    q = h.reshape(h.shape[0], -1)
    logp = jax.nn.log_softmax(q, axis=-1)
    loss = -jnp.mean(logp[jnp.arange(q.shape[0]), labels])
    return q, loss


if __name__ == "__main__":
    # Small, module-consistent config: in_channels=32, hidden_channels=16,
    # num_classes=2, roi_pool_size=7, 8 matched ROIs.
    N, Cin, P = 8, 32, 7
    hid, C = 16, 2
    oc2 = hid // 2

    key = jax.random.PRNGKey(0)
    k_feat, k_w1, k_w2, k_w3, k_lbl = jax.random.split(key, 5)

    # Synthetic RoIAlign output and matcher labels (see TODO(synk) at top).
    roi_feats = jax.random.normal(k_feat, (N, Cin, P, P), jnp.float32)
    labels = jax.random.randint(k_lbl, (N,), 0, C, jnp.int32)

    # Deterministic parameter init (torch Conv2d OIHW shapes, bias=False).
    w1 = 0.05 * jax.random.normal(k_w1, (hid, Cin, 3, 3), jnp.float32)
    w2 = 0.05 * jax.random.normal(k_w2, (oc2, hid, P, P), jnp.float32)
    w3 = 0.05 * jax.random.normal(k_w3, (C, oc2, 1, 1), jnp.float32)

    logits, loss = sam_rpn_bbox_quality_loss(roi_feats, w1, w2, w3, labels)
    logits = jax.block_until_ready(logits)
    loss = jax.block_until_ready(loss)

    ref_logits, ref_loss = _ref_forward(roi_feats, w1, w2, w3, labels)

    # bf16 inputs / f32 accumulation vs f32 reference -> 2e-2 tolerance.
    if not (jnp.allclose(logits, ref_logits, atol=2e-2, rtol=2e-2)
            and jnp.allclose(loss, ref_loss, atol=2e-2, rtol=2e-2)):
        raise AssertionError(
            f"mismatch: loss={loss} ref={ref_loss}\n{logits}\n{ref_logits}")

    print("KERNEL_OK")
</pallas_src>

<mosaic_0001>
module attributes {stable_mosaic.version = 11 : i64} {
  func.func @kernel(%arg0: i32, %arg1: memref<88x16x32xbf16, #tpu.memory_space<vmem>>, %arg2: memref<9x32x16xbf16, #tpu.memory_space<vmem>>, %arg3: memref<49x16x8xbf16, #tpu.memory_space<vmem>>, %arg4: memref<8x2xf32, #tpu.memory_space<vmem>>, %arg5: memref<16x1xi32, #tpu.memory_space<vmem>>, %arg6: memref<16x2xf32, #tpu.memory_space<vmem>>, %arg7: memref<16x1xf32, #tpu.memory_space<vmem>>) attributes {dimension_semantics = [#tpu.dimension_semantics<parallel>], iteration_bounds = array<i64: 1>, scalar_prefetch = 0 : i64, scratch_operands = 0 : i64, tpu.core_type = #tpu.core_type<tc>, window_params = [{transform_indices = @transform_0, window_bounds = array<i64: 88, 16, 32>}, {pipeline_mode = #tpu.pipeline_mode<synchronous>, transform_indices = @transform_1, window_bounds = array<i64: 9, 32, 16>}, {pipeline_mode = #tpu.pipeline_mode<synchronous>, transform_indices = @transform_2, window_bounds = array<i64: 49, 16, 8>}, {pipeline_mode = #tpu.pipeline_mode<synchronous>, transform_indices = @transform_3, window_bounds = array<i64: 8, 2>}, {transform_indices = @transform_4, window_bounds = array<i64: 16, 1>}, {transform_indices = @transform_5, window_bounds = array<i64: 16, 2>}, {transform_indices = @transform_6, window_bounds = array<i64: 16, 1>}]} {
    %c0 = arith.constant 0 : index
    %c0_0 = arith.constant 0 : index
    %c0_1 = arith.constant 0 : index
    %0 = vector.load %arg1[%c0, %c0_0, %c0_1] : memref<88x16x32xbf16, #tpu.memory_space<vmem>>, vector<64x16x32xbf16>
    %1 = vector.shape_cast %0 : vector<64x16x32xbf16> to vector<1024x32xbf16>
    %c0_2 = arith.constant 0 : index
    %c0_3 = arith.constant 0 : index
    %c0_4 = arith.constant 0 : index
    %2 = vector.load %arg2[%c0_2, %c0_3, %c0_4] : memref<9x32x16xbf16, #tpu.memory_space<vmem>>, vector<1x32x16xbf16>
    %3 = vector.shape_cast %2 : vector<1x32x16xbf16> to vector<32x16xbf16>
    %cst = arith.constant dense<0.000000e+00> : vector<1024x16xf32>
    %4 = tpu.matmul %1, %3, %cst {dimension_numbers = #tpu.dot_dimension_numbers<[1], [0], [0], [1], [0, 0, 1, 1], [], []>} : vector<1024x32xbf16>, vector<32x16xbf16>, vector<1024x16xf32> -> vector<1024x16xf32>
    %c1 = arith.constant 1 : index
    %c0_5 = arith.constant 0 : index
    %c0_6 = arith.constant 0 : index
    %5 = vector.load %arg1[%c1, %c0_5, %c0_6] : memref<88x16x32xbf16, #tpu.memory_space<vmem>>, vector<64x16x32xbf16>
    %6 = vector.shape_cast %5 : vector<64x16x32xbf16> to vector<1024x32xbf16>
    %c1_7 = arith.constant 1 : index
    %c0_8 = arith.constant 0 : index
    %c0_9 = arith.constant 0 : index
    %7 = vector.load %arg2[%c1_7, %c0_8, %c0_9] : memref<9x32x16xbf16, #tpu.memory_space<vmem>>, vector<1x32x16xbf16>
    %8 = vector.shape_cast %7 : vector<1x32x16xbf16> to vector<32x16xbf16>
    %cst_10 = arith.constant dense<0.000000e+00> : vector<1024x16xf32>
    %9 = tpu.matmul %6, %8, %cst_10 {dimension_numbers = #tpu.dot_dimension_numbers<[1], [0], [0], [1], [0, 0, 1, 1], [], []>} : vector<1024x32xbf16>, vector<32x16xbf16>, vector<1024x16xf32> -> vector<1024x16xf32>
    %10 = arith.addf %4, %9 : vector<1024x16xf32>
    %c2 = arith.constant 2 : index
    %c0_11 = arith.constant 0 : index
    %c0_12 = arith.constant 0 : index
    %11 = vector.load %arg1[%c2, %c0_11, %c0_12] : memref<88x16x32xbf16, #tpu.memory_space<vmem>>, vector<64x16x32xbf16>
    %12 = vector.shape_cast %11 : vector<64x16x32xbf16> to vector<1024x32xbf16>
    %c2_13 = arith.constant 2 : index
    %c0_14 = arith.constant 0 : index
    %c0_15 = arith.constant 0 : index
    %13 = vector.load %arg2[%c2_13, %c0_14, %c0_15] : memref<9x32x16xbf16, #tpu.memory_space<vmem>>, vector<1x32x16xbf16>
    %14 = vector.shape_cast %13 : vector<1x32x16xbf16> to vector<32x16xbf16>
    %cst_16 = arith.constant dense<0.000000e+00> : vector<1024x16xf32>
    %15 = tpu.matmul %12, %14, %cst_16 {dimension_numbers = #tpu.dot_dimension_numbers<[1], [0], [0], [1], [0, 0, 1, 1], [], []>} : vector<1024x32xbf16>, vector<32x16xbf16>, vector<1024x16xf32> -> vector<1024x16xf32>
    %16 = arith.addf %10, %15 : vector<1024x16xf32>
    %c9 = arith.constant 9 : index
    %c0_17 = arith.constant 0 : index
    %c0_18 = arith.constant 0 : index
    %17 = vector.load %arg1[%c9, %c0_17, %c0_18] : memref<88x16x32xbf16, #tpu.memory_space<vmem>>, vector<64x16x32xbf16>
    %18 = vector.shape_cast %17 : vector<64x16x32xbf16> to vector<1024x32xbf16>
    %c3 = arith.constant 3 : index
    %c0_19 = arith.constant 0 : index
    %c0_20 = arith.constant 0 : index
    %19 = vector.load %arg2[%c3, %c0_19, %c0_20] : memref<9x32x16xbf16, #tpu.memory_space<vmem>>, vector<1x32x16xbf16>
    %20 = vector.shape_cast %19 : vector<1x32x16xbf16> to vector<32x16xbf16>
    %cst_21 = arith.constant dense<0.000000e+00> : vector<1024x16xf32>
    %21 = tpu.matmul %18, %20, %cst_21 {dimension_numbers = #tpu.dot_dimension_numbers<[1], [0], [0], [1], [0, 0, 1, 1], [], []>} : vector<1024x32xbf16>, vector<32x16xbf16>, vector<1024x16xf32> -> vector<1024x16xf32>
    %22 = arith.addf %16, %21 : vector<1024x16xf32>
    %c10 = arith.constant 10 : index
    %c0_22 = arith.constant 0 : index
    %c0_23 = arith.constant 0 : index
    %23 = vector.load %arg1[%c10, %c0_22, %c0_23] : memref<88x16x32xbf16, #tpu.memory_space<vmem>>, vector<64x16x32xbf16>
    %24 = vector.shape_cast %23 : vector<64x16x32xbf16> to vector<1024x32xbf16>
    %c4 = arith.constant 4 : index
    %c0_24 = arith.constant 0 : index
    %c0_25 = arith.constant 0 : index
    %25 = vector.load %arg2[%c4, %c0_24, %c0_25] : memref<9x32x16xbf16, #tpu.memory_space<vmem>>, vector<1x32x16xbf16>
    %26 = vector.shape_cast %25 : vector<1x32x16xbf16> to vector<32x16xbf16>
    %cst_26 = arith.constant dense<0.000000e+00> : vector<1024x16xf32>
    %27 = tpu.matmul %24, %26, %cst_26 {dimension_numbers = #tpu.dot_dimension_numbers<[1], [0], [0], [1], [0, 0, 1, 1], [], []>} : vector<1024x32xbf16>, vector<32x16xbf16>, vector<1024x16xf32> -> vector<1024x16xf32>
    %28 = arith.addf %22, %27 : vector<1024x16xf32>
    %c11 = arith.constant 11 : index
    %c0_27 = arith.constant 0 : index
    %c0_28 = arith.constant 0 : index
    %29 = vector.load %arg1[%c11, %c0_27, %c0_28] : memref<88x16x32xbf16, #tpu.memory_space<vmem>>, vector<64x16x32xbf16>
    %30 = vector.shape_cast %29 : vector<64x16x32xbf16> to vector<1024x32xbf16>
    %c5 = arith.constant 5 : index
    %c0_29 = arith.constant 0 : index
    %c0_30 = arith.constant 0 : index
    %31 = vector.load %arg2[%c5, %c0_29, %c0_30] : memref<9x32x16xbf16, #tpu.memory_space<vmem>>, vector<1x32x16xbf16>
    %32 = vector.shape_cast %31 : vector<1x32x16xbf16> to vector<32x16xbf16>
    %cst_31 = arith.constant dense<0.000000e+00> : vector<1024x16xf32>
    %33 = tpu.matmul %30, %32, %cst_31 {dimension_numbers = #tpu.dot_dimension_numbers<[1], [0], [0], [1], [0, 0, 1, 1], [], []>} : vector<1024x32xbf16>, vector<32x16xbf16>, vector<1024x16xf32> -> vector<1024x16xf32>
    %34 = arith.addf %28, %33 : vector<1024x16xf32>
    %c18 = arith.constant 18 : index
    %c0_32 = arith.constant 0 : index
    %c0_33 = arith.constant 0 : index
    %35 = vector.load %arg1[%c18, %c0_32, %c0_33] : memref<88x16x32xbf16, #tpu.memory_space<vmem>>, vector<64x16x32xbf16>
    %36 = vector.shape_cast %35 : vector<64x16x32xbf16> to vector<1024x32xbf16>
    %c6 = arith.constant 6 : index
    %c0_34 = arith.constant 0 : index
    %c0_35 = arith.constant 0 : index
    %37 = vector.load %arg2[%c6, %c0_34, %c0_35] : memref<9x32x16xbf16, #tpu.memory_space<vmem>>, vector<1x32x16xbf16>
    %38 = vector.shape_cast %37 : vector<1x32x16xbf16> to vector<32x16xbf16>
    %cst_36 = arith.constant dense<0.000000e+00> : vector<1024x16xf32>
    %39 = tpu.matmul %36, %38, %cst_36 {dimension_numbers = #tpu.dot_dimension_numbers<[1], [0], [0], [1], [0, 0, 1, 1], [], []>} : vector<1024x32xbf16>, vector<32x16xbf16>, vector<1024x16xf32> -> vector<1024x16xf32>
    %40 = arith.addf %34, %39 : vector<1024x16xf32>
    %c19 = arith.constant 19 : index
    %c0_37 = arith.constant 0 : index
    %c0_38 = arith.constant 0 : index
    %41 = vector.load %arg1[%c19, %c0_37, %c0_38] : memref<88x16x32xbf16, #tpu.memory_space<vmem>>, vector<64x16x32xbf16>
    %42 = vector.shape_cast %41 : vector<64x16x32xbf16> to vector<1024x32xbf16>
    %c7 = arith.constant 7 : index
    %c0_39 = arith.constant 0 : index
    %c0_40 = arith.constant 0 : index
    %43 = vector.load %arg2[%c7, %c0_39, %c0_40] : memref<9x32x16xbf16, #tpu.memory_space<vmem>>, vector<1x32x16xbf16>
    %44 = vector.shape_cast %43 : vector<1x32x16xbf16> to vector<32x16xbf16>
    %cst_41 = arith.constant dense<0.000000e+00> : vector<1024x16xf32>
    %45 = tpu.matmul %42, %44, %cst_41 {dimension_numbers = #tpu.dot_dimension_numbers<[1], [0], [0], [1], [0, 0, 1, 1], [], []>} : vector<1024x32xbf16>, vector<32x16xbf16>, vector<1024x16xf32> -> vector<1024x16xf32>
    %46 = arith.addf %40, %45 : vector<1024x16xf32>
    %c20 = arith.constant 20 : index
    %c0_42 = arith.constant 0 : index
    %c0_43 = arith.constant 0 : index
    %47 = vector.load %arg1[%c20, %c0_42, %c0_43] : memref<88x16x32xbf16, #tpu.memory_space<vmem>>, vector<64x16x32xbf16>
    %48 = vector.shape_cast %47 : vector<64x16x32xbf16> to vector<1024x32xbf16>
    %c8 = arith.constant 8 : index
    %c0_44 = arith.constant 0 : index
    %c0_45 = arith.constant 0 : index
    %49 = vector.load %arg2[%c8, %c0_44, %c0_45] : memref<9x32x16xbf16, #tpu.memory_space<vmem>>, vector<1x32x16xbf16>
    %50 = vector.shape_cast %49 : vector<1x32x16xbf16> to vector<32x16xbf16>
    %cst_46 = arith.constant dense<0.000000e+00> : vector<1024x16xf32>
    %51 = tpu.matmul %48, %50, %cst_46 {dimension_numbers = #tpu.dot_dimension_numbers<[1], [0], [0], [1], [0, 0, 1, 1], [], []>} : vector<1024x32xbf16>, vector<32x16xbf16>, vector<1024x16xf32> -> vector<1024x16xf32>
    %52 = arith.addf %46, %51 : vector<1024x16xf32>
    %cst_47 = arith.constant 0.000000e+00 : f32
    %53 = vector.broadcast %cst_47 : f32 to vector<1024x16xf32>
    %54 = arith.maximumf %52, %53 : vector<1024x16xf32>
    %55 = arith.truncf %54 : vector<1024x16xf32> to vector<1024x16xbf16>
    %56 = vector.shape_cast %55 : vector<1024x16xbf16> to vector<64x16x16xbf16>
    %57 = vector.extract_strided_slice %56 {offsets = [0, 0, 0], sizes = [1, 16, 16], strides = [1, 1, 1]} : vector<64x16x16xbf16> to vector<1x16x16xbf16>
    %58 = vector.shape_cast %57 : vector<1x16x16xbf16> to vector<16x16xbf16>
    %c0_48 = arith.constant 0 : index
    %c0_49 = arith.constant 0 : index
    %c0_50 = arith.constant 0 : index
    %59 = vector.load %arg3[%c0_48, %c0_49, %c0_50] : memref<49x16x8xbf16, #tpu.memory_space<vmem>>, vector<1x16x8xbf16>
    %60 = vector.shape_cast %59 : vector<1x16x8xbf16> to vector<16x8xbf16>
    %cst_51 = arith.constant dense<0.000000e+00> : vector<16x8xf32>
    %61 = tpu.matmul %58, %60, %cst_51 {dimension_numbers = #tpu.dot_dimension_numbers<[1], [0], [0], [1], [0, 0, 1, 1], [], []>} : vector<16x16xbf16>, vector<16x8xbf16>, vector<16x8xf32> -> vector<16x8xf32>
    %62 = vector.extract_strided_slice %56 {offsets = [1, 0, 0], sizes = [1, 16, 16], strides = [1, 1, 1]} : vector<64x16x16xbf16> to vector<1x16x16xbf16>
    %63 = vector.shape_cast %62 : vector<1x16x16xbf16> to vector<16x16xbf16>
    %c1_52 = arith.constant 1 : index
    %c0_53 = arith.constant 0 : index
    %c0_54 = arith.constant 0 : index
    %64 = vector.load %arg3[%c1_52, %c0_53, %c0_54] : memref<49x16x8xbf16, #tpu.memory_space<vmem>>, vector<1x16x8xbf16>
    %65 = vector.shape_cast %64 : vector<1x16x8xbf16> to vector<16x8xbf16>
    %cst_55 = arith.constant dense<0.000000e+00> : vector<16x8xf32>
    %66 = tpu.matmul %63, %65, %cst_55 {dimension_numbers = #tpu.dot_dimension_numbers<[1], [0], [0], [1], [0, 0, 1, 1], [], []>} : vector<16x16xbf16>, vector<16x8xbf16>, vector<16x8xf32> -> vector<16x8xf32>
    %67 = arith.addf %61, %66 : vector<16x8xf32>
    %68 = vector.extract_strided_slice %56 {offsets = [2, 0, 0], sizes = [1, 16, 16], strides = [1, 1, 1]} : vector<64x16x16xbf16> to vector<1x16x16xbf16>
    %69 = vector.shape_cast %68 : vector<1x16x16xbf16> to vector<16x16xbf16>
    %c2_56 = arith.constant 2 : index
    %c0_57 = arith.constant 0 : index
    %c0_58 = arith.constant 0 : index
    %70 = vector.load %arg3[%c2_56, %c0_57, %c0_58] : memref<49x16x8xbf16, #tpu.memory_space<vmem>>, vector<1x16x8xbf16>
    %71 = vector.shape_cast %70 : vector<1x16x8xbf16> to vector<16x8xbf16>
    %cst_59 = arith.constant dense<0.000000e+00> : vector<16x8xf32>
    %72 = tpu.matmul %69, %71, %cst_59 {dimension_numbers = #tpu.dot_dimension_numbers<[1], [0], [0], [1], [0, 0, 1, 1], [], []>} : vector<16x16xbf16>, vector<16x8xbf16>, vector<16x8xf32> -> vector<16x8xf32>
    %73 = arith.addf %67, %72 : vector<16x8xf32>
    %74 = vector.extract_strided_slice %56 {offsets = [3, 0, 0], sizes = [1, 16, 16], strides = [1, 1, 1]} : vector<64x16x16xbf16> to vector<1x16x16xbf16>
    %75 = vector.shape_cast %74 : vector<1x16x16xbf16> to vector<16x16xbf16>
    %c3_60 = arith.constant 3 : index
    %c0_61 = arith.constant 0 : index
    %c0_62 = arith.constant 0 : index
    %76 = vector.load %arg3[%c3_60, %c0_61, %c0_62] : memref<49x16x8xbf16, #tpu.memory_space<vmem>>, vector<1x16x8xbf16>
    %77 = vector.shape_cast %76 : vector<1x16x8xbf16> to vector<16x8xbf16>
    %cst_63 = arith.constant dense<0.000000e+00> : vector<16x8xf32>
    %78 = tpu.matmul %75, %77, %cst_63 {dimension_numbers = #tpu.dot_dimension_numbers<[1], [0], [0], [1], [0, 0, 1, 1], [], []>} : vector<16x16xbf16>, vector<16x8xbf16>, vector<16x8xf32> -> vector<16x8xf32>
    %79 = arith.addf %73, %78 : vector<16x8xf32>
    %80 = vector.extract_strided_slice %56 {offsets = [4, 0, 0], sizes = [1, 16, 16], strides = [1, 1, 1]} : vector<64x16x16xbf16> to vector<1x16x16xbf16>
    %81 = vector.shape_cast %80 : vector<1x16x16xbf16> to vector<16x16xbf16>
    %c4_64 = arith.constant 4 : index
    %c0_65 = arith.constant 0 : index
    %c0_66 = arith.constant 0 : index
    %82 = vector.load %arg3[%c4_64, %c0_65, %c0_66] : memref<49x16x8xbf16, #tpu.memory_space<vmem>>, vector<1x16x8xbf16>
    %83 = vector.shape_cast %82 : vector<1x16x8xbf16> to vector<16x8xbf16>
    %cst_67 = arith.constant dense<0.000000e+00> : vector<16x8xf32>
    %84 = tpu.matmul %81, %83, %cst_67 {dimension_numbers = #tpu.dot_dimension_numbers<[1], [0], [0], [1], [0, 0, 1, 1], [], []>} : vector<16x16xbf16>, vector<16x8xbf16>, vector<16x8xf32> -> vector<16x8xf32>
    %85 = arith.addf %79, %84 : vector<16x8xf32>
    %86 = vector.extract_strided_slice %56 {offsets = [5, 0, 0], sizes = [1, 16, 16], strides = [1, 1, 1]} : vector<64x16x16xbf16> to vector<1x16x16xbf16>
    %87 = vector.shape_cast %86 : vector<1x16x16xbf16> to vector<16x16xbf16>
    %c5_68 = arith.constant 5 : index
    %c0_69 = arith.constant 0 : index
    %c0_70 = arith.constant 0 : index
    %88 = vector.load %arg3[%c5_68, %c0_69, %c0_70] : memref<49x16x8xbf16, #tpu.memory_space<vmem>>, vector<1x16x8xbf16>
    %89 = vector.shape_cast %88 : vector<1x16x8xbf16> to vector<16x8xbf16>
    %cst_71 = arith.constant dense<0.000000e+00> : vector<16x8xf32>
    %90 = tpu.matmul %87, %89, %cst_71 {dimension_numbers = #tpu.dot_dimension_numbers<[1], [0], [0], [1], [0, 0, 1, 1], [], []>} : vector<16x16xbf16>, vector<16x8xbf16>, vector<16x8xf32> -> vector<16x8xf32>
    %91 = arith.addf %85, %90 : vector<16x8xf32>
    %92 = vector.extract_strided_slice %56 {offsets = [6, 0, 0], sizes = [1, 16, 16], strides = [1, 1, 1]} : vector<64x16x16xbf16> to vector<1x16x16xbf16>
    %93 = vector.shape_cast %92 : vector<1x16x16xbf16> to vector<16x16xbf16>
    %c6_72 = arith.constant 6 : index
    %c0_73 = arith.constant 0 : index
    %c0_74 = arith.constant 0 : index
    %94 = vector.load %arg3[%c6_72, %c0_73, %c0_74] : memref<49x16x8xbf16, #tpu.memory_space<vmem>>, vector<1x16x8xbf16>
    %95 = vector.shape_cast %94 : vector<1x16x8xbf16> to vector<16x8xbf16>
    %cst_75 = arith.constant dense<0.000000e+00> : vector<16x8xf32>
    %96 = tpu.matmul %93, %95, %cst_75 {dimension_numbers = #tpu.dot_dimension_numbers<[1], [0], [0], [1], [0, 0, 1, 1], [], []>} : vector<16x16xbf16>, vector<16x8xbf16>, vector<16x8xf32> -> vector<16x8xf32>
    %97 = arith.addf %91, %96 : vector<16x8xf32>
    %98 = vector.extract_strided_slice %56 {offsets = [9, 0, 0], sizes = [1, 16, 16], strides = [1, 1, 1]} : vector<64x16x16xbf16> to vector<1x16x16xbf16>
    %99 = vector.shape_cast %98 : vector<1x16x16xbf16> to vector<16x16xbf16>
    %c7_76 = arith.constant 7 : index
    %c0_77 = arith.constant 0 : index
    %c0_78 = arith.constant 0 : index
    %100 = vector.load %arg3[%c7_76, %c0_77, %c0_78] : memref<49x16x8xbf16, #tpu.memory_space<vmem>>, vector<1x16x8xbf16>
    %101 = vector.shape_cast %100 : vector<1x16x8xbf16> to vector<16x8xbf16>
    %cst_79 = arith.constant dense<0.000000e+00> : vector<16x8xf32>
    %102 = tpu.matmul %99, %101, %cst_79 {dimension_numbers = #tpu.dot_dimension_numbers<[1], [0], [0], [1], [0, 0, 1, 1], [], []>} : vector<16x16xbf16>, vector<16x8xbf16>, vector<16x8xf32> -> vector<16x8xf32>
    %103 = arith.addf %97, %102 : vector<16x8xf32>
    %104 = vector.extract_strided_slice %56 {offsets = [10, 0, 0], sizes = [1, 16, 16], strides = [1, 1, 1]} : vector<64x16x16xbf16> to vector<1x16x16xbf16>
    %105 = vector.shape_cast %104 : vector<1x16x16xbf16> to vector<16x16xbf16>
    %c8_80 = arith.constant 8 : index
    %c0_81 = arith.constant 0 : index
    %c0_82 = arith.constant 0 : index
    %106 = vector.load %arg3[%c8_80, %c0_81, %c0_82] : memref<49x16x8xbf16, #tpu.memory_space<vmem>>, vector<1x16x8xbf16>
    %107 = vector.shape_cast %106 : vector<1x16x8xbf16> to vector<16x8xbf16>
    %cst_83 = arith.constant dense<0.000000e+00> : vector<16x8xf32>
    %108 = tpu.matmul %105, %107, %cst_83 {dimension_numbers = #tpu.dot_dimension_numbers<[1], [0], [0], [1], [0, 0, 1, 1], [], []>} : vector<16x16xbf16>, vector<16x8xbf16>, vector<16x8xf32> -> vector<16x8xf32>
    %109 = arith.addf %103, %108 : vector<16x8xf32>
    %110 = vector.extract_strided_slice %56 {offsets = [11, 0, 0], sizes = [1, 16, 16], strides = [1, 1, 1]} : vector<64x16x16xbf16> to vector<1x16x16xbf16>
    %111 = vector.shape_cast %110 : vector<1x16x16xbf16> to vector<16x16xbf16>
    %c9_84 = arith.constant 9 : index
    %c0_85 = arith.constant 0 : index
    %c0_86 = arith.constant 0 : index
    %112 = vector.load %arg3[%c9_84, %c0_85, %c0_86] : memref<49x16x8xbf16, #tpu.memory_space<vmem>>, vector<1x16x8xbf16>
    %113 = vector.shape_cast %112 : vector<1x16x8xbf16> to vector<16x8xbf16>
    %cst_87 = arith.constant dense<0.000000e+00> : vector<16x8xf32>
    %114 = tpu.matmul %111, %113, %cst_87 {dimension_numbers = #tpu.dot_dimension_numbers<[1], [0], [0], [1], [0, 0, 1, 1], [], []>} : vector<16x16xbf16>, vector<16x8xbf16>, vector<16x8xf32> -> vector<16x8xf32>
    %115 = arith.addf %109, %114 : vector<16x8xf32>
    %116 = vector.extract_strided_slice %56 {offsets = [12, 0, 0], sizes = [1, 16, 16], strides = [1, 1, 1]} : vector<64x16x16xbf16> to vector<1x16x16xbf16>
    %117 = vector.shape_cast %116 : vector<1x16x16xbf16> to vector<16x16xbf16>
    %c10_88 = arith.constant 10 : index
    %c0_89 = arith.constant 0 : index
    %c0_90 = arith.constant 0 : index
    %118 = vector.load %arg3[%c10_88, %c0_89, %c0_90] : memref<49x16x8xbf16, #tpu.memory_space<vmem>>, vector<1x16x8xbf16>
    %119 = vector.shape_cast %118 : vector<1x16x8xbf16> to vector<16x8xbf16>
    %cst_91 = arith.constant dense<0.000000e+00> : vector<16x8xf32>
    %120 = tpu.matmul %117, %119, %cst_91 {dimension_numbers = #tpu.dot_dimension_numbers<[1], [0], [0], [1], [0, 0, 1, 1], [], []>} : vector<16x16xbf16>, vector<16x8xbf16>, vector<16x8xf32> -> vector<16x8xf32>
    %121 = arith.addf %115, %120 : vector<16x8xf32>
    %122 = vector.extract_strided_slice %56 {offsets = [13, 0, 0], sizes = [1, 16, 16], strides = [1, 1, 1]} : vector<64x16x16xbf16> to vector<1x16x16xbf16>
    %123 = vector.shape_cast %122 : vector<1x16x16xbf16> to vector<16x16xbf16>
    %c11_92 = arith.constant 11 : index
    %c0_93 = arith.constant 0 : index
    %c0_94 = arith.constant 0 : index
    %124 = vector.load %arg3[%c11_92, %c0_93, %c0_94] : memref<49x16x8xbf16, #tpu.memory_space<vmem>>, vector<1x16x8xbf16>
    %125 = vector.shape_cast %124 : vector<1x16x8xbf16> to vector<16x8xbf16>
    %cst_95 = arith.constant dense<0.000000e+00> : vector<16x8xf32>
    %126 = tpu.matmul %123, %125, %cst_95 {dimension_numbers = #tpu.dot_dimension_numbers<[1], [0], [0], [1], [0, 0, 1, 1], [], []>} : vector<16x16xbf16>, vector<16x8xbf16>, vector<16x8xf32> -> vector<16x8xf32>
    %127 = arith.addf %121, %126 : vector<16x8xf32>
    %128 = vector.extract_strided_slice %56 {offsets = [14, 0, 0], sizes = [1, 16, 16], strides = [1, 1, 1]} : vector<64x16x16xbf16> to vector<1x16x16xbf16>
    %129 = vector.shape_cast %128 : vector<1x16x16xbf16> to vector<16x16xbf16>
    %c12 = arith.constant 12 : index
    %c0_96 = arith.constant 0 : index
    %c0_97 = arith.constant 0 : index
    %130 = vector.load %arg3[%c12, %c0_96, %c0_97] : memref<49x16x8xbf16, #tpu.memory_space<vmem>>, vector<1x16x8xbf16>
    %131 = vector.shape_cast %130 : vector<1x16x8xbf16> to vector<16x8xbf16>
    %cst_98 = arith.constant dense<0.000000e+00> : vector<16x8xf32>
    %132 = tpu.matmul %129, %131, %cst_98 {dimension_numbers = #tpu.dot_dimension_numbers<[1], [0], [0], [1], [0, 0, 1, 1], [], []>} : vector<16x16xbf16>, vector<16x8xbf16>, vector<16x8xf32> -> vector<16x8xf32>
    %133 = arith.addf %127, %132 : vector<16x8xf32>
    %134 = vector.extract_strided_slice %56 {offsets = [15, 0, 0], sizes = [1, 16, 16], strides = [1, 1, 1]} : vector<64x16x16xbf16> to vector<1x16x16xbf16>
    %135 = vector.shape_cast %134 : vector<1x16x16xbf16> to vector<16x16xbf16>
    %c13 = arith.constant 13 : index
    %c0_99 = arith.constant 0 : index
    %c0_100 = arith.constant 0 : index
    %136 = vector.load %arg3[%c13, %c0_99, %c0_100] : memref<49x16x8xbf16, #tpu.memory_space<vmem>>, vector<1x16x8xbf16>
    %137 = vector.shape_cast %136 : vector<1x16x8xbf16> to vector<16x8xbf16>
    %cst_101 = arith.constant dense<0.000000e+00> : vector<16x8xf32>
    %138 = tpu.matmul %135, %137, %cst_101 {dimension_numbers = #tpu.dot_dimension_numbers<[1], [0], [0], [1], [0, 0, 1, 1], [], []>} : vector<16x16xbf16>, vector<16x8xbf16>, vector<16x8xf32> -> vector<16x8xf32>
    %139 = arith.addf %133, %138 : vector<16x8xf32>
    %140 = vector.extract_strided_slice %56 {offsets = [18, 0, 0], sizes = [1, 16, 16], strides = [1, 1, 1]} : vector<64x16x16xbf16> to vector<1x16x16xbf16>
    %141 = vector.shape_cast %140 : vector<1x16x16xbf16> to vector<16x16xbf16>
    %c14 = arith.constant 14 : index
    %c0_102 = arith.constant 0 : index
    %c0_103 = arith.constant 0 : index
    %142 = vector.load %arg3[%c14, %c0_102, %c0_103] : memref<49x16x8xbf16, #tpu.memory_space<vmem>>, vector<1x16x8xbf16>
    %143 = vector.shape_cast %142 : vector<1x16x8xbf16> to vector<16x8xbf16>
    %cst_104 = arith.constant dense<0.000000e+00> : vector<16x8xf32>
    %144 = tpu.matmul %141, %143, %cst_104 {dimension_numbers = #tpu.dot_dimension_numbers<[1], [0], [0], [1], [0, 0, 1, 1], [], []>} : vector<16x16xbf16>, vector<16x8xbf16>, vector<16x8xf32> -> vector<16x8xf32>
    %145 = arith.addf %139, %144 : vector<16x8xf32>
    %146 = vector.extract_strided_slice %56 {offsets = [19, 0, 0], sizes = [1, 16, 16], strides = [1, 1, 1]} : vector<64x16x16xbf16> to vector<1x16x16xbf16>
    %147 = vector.shape_cast %146 : vector<1x16x16xbf16> to vector<16x16xbf16>
    %c15 = arith.constant 15 : index
    %c0_105 = arith.constant 0 : index
    %c0_106 = arith.constant 0 : index
    %148 = vector.load %arg3[%c15, %c0_105, %c0_106] : memref<49x16x8xbf16, #tpu.memory_space<vmem>>, vector<1x16x8xbf16>
    %149 = vector.shape_cast %148 : vector<1x16x8xbf16> to vector<16x8xbf16>
    %cst_107 = arith.constant dense<0.000000e+00> : vector<16x8xf32>
    %150 = tpu.matmul %147, %149, %cst_107 {dimension_numbers = #tpu.dot_dimension_numbers<[1], [0], [0], [1], [0, 0, 1, 1], [], []>} : vector<16x16xbf16>, vector<16x8xbf16>, vector<16x8xf32> -> vector<16x8xf32>
    %151 = arith.addf %145, %150 : vector<16x8xf32>
    %152 = vector.extract_strided_slice %56 {offsets = [20, 0, 0], sizes = [1, 16, 16], strides = [1, 1, 1]} : vector<64x16x16xbf16> to vector<1x16x16xbf16>
    %153 = vector.shape_cast %152 : vector<1x16x16xbf16> to vector<16x16xbf16>
    %c16 = arith.constant 16 : index
    %c0_108 = arith.constant 0 : index
    %c0_109 = arith.constant 0 : index
    %154 = vector.load %arg3[%c16, %c0_108, %c0_109] : memref<49x16x8xbf16, #tpu.memory_space<vmem>>, vector<1x16x8xbf16>
    %155 = vector.shape_cast %154 : vector<1x16x8xbf16> to vector<16x8xbf16>
    %cst_110 = arith.constant dense<0.000000e+00> : vector<16x8xf32>
    %156 = tpu.matmul %153, %155, %cst_110 {dimension_numbers = #tpu.dot_dimension_numbers<[1], [0], [0], [1], [0, 0, 1, 1], [], []>} : vector<16x16xbf16>, vector<16x8xbf16>, vector<16x8xf32> -> vector<16x8xf32>
    %157 = arith.addf %151, %156 : vector<16x8xf32>
    %158 = vector.extract_strided_slice %56 {offsets = [21, 0, 0], sizes = [1, 16, 16], strides = [1, 1, 1]} : vector<64x16x16xbf16> to vector<1x16x16xbf16>
    %159 = vector.shape_cast %158 : vector<1x16x16xbf16> to vector<16x16xbf16>
    %c17 = arith.constant 17 : index
    %c0_111 = arith.constant 0 : index
    %c0_112 = arith.constant 0 : index
    %160 = vector.load %arg3[%c17, %c0_111, %c0_112] : memref<49x16x8xbf16, #tpu.memory_space<vmem>>, vector<1x16x8xbf16>
    %161 = vector.shape_cast %160 : vector<1x16x8xbf16> to vector<16x8xbf16>
    %cst_113 = arith.constant dense<0.000000e+00> : vector<16x8xf32>
    %162 = tpu.matmul %159, %161, %cst_113 {dimension_numbers = #tpu.dot_dimension_numbers<[1], [0], [0], [1], [0, 0, 1, 1], [], []>} : vector<16x16xbf16>, vector<16x8xbf16>, vector<16x8xf32> -> vector<16x8xf32>
    %163 = arith.addf %157, %162 : vector<16x8xf32>
    %164 = vector.extract_strided_slice %56 {offsets = [22, 0, 0], sizes = [1, 16, 16], strides = [1, 1, 1]} : vector<64x16x16xbf16> to vector<1x16x16xbf16>
    %165 = vector.shape_cast %164 : vector<1x16x16xbf16> to vector<16x16xbf16>
    %c18_114 = arith.constant 18 : index
    %c0_115 = arith.constant 0 : index
    %c0_116 = arith.constant 0 : index
    %166 = vector.load %arg3[%c18_114, %c0_115, %c0_116] : memref<49x16x8xbf16, #tpu.memory_space<vmem>>, vector<1x16x8xbf16>
    %167 = vector.shape_cast %166 : vector<1x16x8xbf16> to vector<16x8xbf16>
    %cst_117 = arith.constant dense<0.000000e+00> : vector<16x8xf32>
    %168 = tpu.matmul %165, %167, %cst_117 {dimension_numbers = #tpu.dot_dimension_numbers<[1], [0], [0], [1], [0, 0, 1, 1], [], []>} : vector<16x16xbf16>, vector<16x8xbf16>, vector<16x8xf32> -> vector<16x8xf32>
    %169 = arith.addf %163, %168 : vector<16x8xf32>
    %170 = vector.extract_strided_slice %56 {offsets = [23, 0, 0], sizes = [1, 16, 16], strides = [1, 1, 1]} : vector<64x16x16xbf16> to vector<1x16x16xbf16>
    %171 = vector.shape_cast %170 : vector<1x16x16xbf16> to vector<16x16xbf16>
    %c19_118 = arith.constant 19 : index
    %c0_119 = arith.constant 0 : index
    %c0_120 = arith.constant 0 : index
    %172 = vector.load %arg3[%c19_118, %c0_119, %c0_120] : memref<49x16x8xbf16, #tpu.memory_space<vmem>>, vector<1x16x8xbf16>
    %173 = vector.shape_cast %172 : vector<1x16x8xbf16> to vector<16x8xbf16>
    %cst_121 = arith.constant dense<0.000000e+00> : vector<16x8xf32>
    %174 = tpu.matmul %171, %173, %cst_121 {dimension_numbers = #tpu.dot_dimension_numbers<[1], [0], [0], [1], [0, 0, 1, 1], [], []>} : vector<16x16xbf16>, vector<16x8xbf16>, vector<16x8xf32> -> vector<16x8xf32>
    %175 = arith.addf %169, %174 : vector<16x8xf32>
    %176 = vector.extract_strided_slice %56 {offsets = [24, 0, 0], sizes = [1, 16, 16], strides = [1, 1, 1]} : vector<64x16x16xbf16> to vector<1x16x16xbf16>
    %177 = vector.shape_cast %176 : vector<1x16x16xbf16> to vector<16x16xbf16>
    %c20_122 = arith.constant 20 : index
    %c0_123 = arith.constant 0 : index
    %c0_124 = arith.constant 0 : index
    %178 = vector.load %arg3[%c20_122, %c0_123, %c0_124] : memref<49x16x8xbf16, #tpu.memory_space<vmem>>, vector<1x16x8xbf16>
    %179 = vector.shape_cast %178 : vector<1x16x8xbf16> to vector<16x8xbf16>
    %cst_125 = arith.constant dense<0.000000e+00> : vector<16x8xf32>
    %180 = tpu.matmul %177, %179, %cst_125 {dimension_numbers = #tpu.dot_dimension_numbers<[1], [0], [0], [1], [0, 0, 1, 1], [], []>} : vector<16x16xbf16>, vector<16x8xbf16>, vector<16x8xf32> -> vector<16x8xf32>
    %181 = arith.addf %175, %180 : vector<16x8xf32>
    %182 = vector.extract_strided_slice %56 {offsets = [27, 0, 0], sizes = [1, 16, 16], strides = [1, 1, 1]} : vector<64x16x16xbf16> to vector<1x16x16xbf16>
    %183 = vector.shape_cast %182 : vector<1x16x16xbf16> to vector<16x16xbf16>
    %c21 = arith.constant 21 : index
    %c0_126 = arith.constant 0 : index
    %c0_127 = arith.constant 0 : index
    %184 = vector.load %arg3[%c21, %c0_126, %c0_127] : memref<49x16x8xbf16, #tpu.memory_space<vmem>>, vector<1x16x8xbf16>
    %185 = vector.shape_cast %184 : vector<1x16x8xbf16> to vector<16x8xbf16>
    %cst_128 = arith.constant dense<0.000000e+00> : vector<16x8xf32>
    %186 = tpu.matmul %183, %185, %cst_128 {dimension_numbers = #tpu.dot_dimension_numbers<[1], [0], [0], [1], [0, 0, 1, 1], [], []>} : vector<16x16xbf16>, vector<16x8xbf16>, vector<16x8xf32> -> vector<16x8xf32>
    %187 = arith.addf %181, %186 : vector<16x8xf32>
    %188 = vector.extract_strided_slice %56 {offsets = [28, 0, 0], sizes = [1, 16, 16], strides = [1, 1, 1]} : vector<64x16x16xbf16> to vector<1x16x16xbf16>
    %189 = vector.shape_cast %188 : vector<1x16x16xbf16> to vector<16x16xbf16>
    %c22 = arith.constant 22 : index
    %c0_129 = arith.constant 0 : index
    %c0_130 = arith.constant 0 : index
    %190 = vector.load %arg3[%c22, %c0_129, %c0_130] : memref<49x16x8xbf16, #tpu.memory_space<vmem>>, vector<1x16x8xbf16>
    %191 = vector.shape_cast %190 : vector<1x16x8xbf16> to vector<16x8xbf16>
    %cst_131 = arith.constant dense<0.000000e+00> : vector<16x8xf32>
    %192 = tpu.matmul %189, %191, %cst_131 {dimension_numbers = #tpu.dot_dimension_numbers<[1], [0], [0], [1], [0, 0, 1, 1], [], []>} : vector<16x16xbf16>, vector<16x8xbf16>, vector<16x8xf32> -> vector<16x8xf32>
    %193 = arith.addf %187, %192 : vector<16x8xf32>
    %194 = vector.extract_strided_slice %56 {offsets = [29, 0, 0], sizes = [1, 16, 16], strides = [1, 1, 1]} : vector<64x16x16xbf16> to vector<1x16x16xbf16>
    %195 = vector.shape_cast %194 : vector<1x16x16xbf16> to vector<16x16xbf16>
    %c23 = arith.constant 23 : index
    %c0_132 = arith.constant 0 : index
    %c0_133 = arith.constant 0 : index
    %196 = vector.load %arg3[%c23, %c0_132, %c0_133] : memref<49x16x8xbf16, #tpu.memory_space<vmem>>, vector<1x16x8xbf16>
    %197 = vector.shape_cast %196 : vector<1x16x8xbf16> to vector<16x8xbf16>
    %cst_134 = arith.constant dense<0.000000e+00> : vector<16x8xf32>
    %198 = tpu.matmul %195, %197, %cst_134 {dimension_numbers = #tpu.dot_dimension_numbers<[1], [0], [0], [1], [0, 0, 1, 1], [], []>} : vector<16x16xbf16>, vector<16x8xbf16>, vector<16x8xf32> -> vector<16x8xf32>
    %199 = arith.addf %193, %198 : vector<16x8xf32>
    %200 = vector.extract_strided_slice %56 {offsets = [30, 0, 0], sizes = [1, 16, 16], strides = [1, 1, 1]} : vector<64x16x16xbf16> to vector<1x16x16xbf16>
    %201 = vector.shape_cast %200 : vector<1x16x16xbf16> to vector<16x16xbf16>
    %c24 = arith.constant 24 : index
    %c0_135 = arith.constant 0 : index
    %c0_136 = arith.constant 0 : index
    %202 = vector.load %arg3[%c24, %c0_135, %c0_136] : memref<49x16x8xbf16, #tpu.memory_space<vmem>>, vector<1x16x8xbf16>
    %203 = vector.shape_cast %202 : vector<1x16x8xbf16> to vector<16x8xbf16>
    %cst_137 = arith.constant dense<0.000000e+00> : vector<16x8xf32>
    %204 = tpu.matmul %201, %203, %cst_137 {dimension_numbers = #tpu.dot_dimension_numbers<[1], [0], [0], [1], [0, 0, 1, 1], [], []>} : vector<16x16xbf16>, vector<16x8xbf16>, vector<16x8xf32> -> vector<16x8xf32>
    %205 = arith.addf %199, %204 : vector<16x8xf32>
    %206 = vector.extract_strided_slice %56 {offsets = [31, 0, 0], sizes = [1, 16, 16], strides = [1, 1, 1]} : vector<64x16x16xbf16> to vector<1x16x16xbf16>
    %207 = vector.shape_cast %206 : vector<1x16x16xbf16> to vector<16x16xbf16>
    %c25 = arith.constant 25 : index
    %c0_138 = arith.constant 0 : index
    %c0_139 = arith.constant 0 : index
    %208 = vector.load %arg3[%c25, %c0_138, %c0_139] : memref<49x16x8xbf16, #tpu.memory_space<vmem>>, vector<1x16x8xbf16>
    %209 = vector.shape_cast %208 : vector<1x16x8xbf16> to vector<16x8xbf16>
    %cst_140 = arith.constant dense<0.000000e+00> : vector<16x8xf32>
    %210 = tpu.matmul %207, %209, %cst_140 {dimension_numbers = #tpu.dot_dimension_numbers<[1], [0], [0], [1], [0, 0, 1, 1], [], []>} : vector<16x16xbf16>, vector<16x8xbf16>, vector<16x8xf32> -> vector<16x8xf32>
    %211 = arith.addf %205, %210 : vector<16x8xf32>
    %212 = vector.extract_strided_slice %56 {offsets = [32, 0, 0], sizes = [1, 16, 16], strides = [1, 1, 1]} : vector<64x16x16xbf16> to vector<1x16x16xbf16>
    %213 = vector.shape_cast %212 : vector<1x16x16xbf16> to vector<16x16xbf16>
    %c26 = arith.constant 26 : index
    %c0_141 = arith.constant 0 : index
    %c0_142 = arith.constant 0 : index
    %214 = vector.load %arg3[%c26, %c0_141, %c0_142] : memref<49x16x8xbf16, #tpu.memory_space<vmem>>, vector<1x16x8xbf16>
    %215 = vector.shape_cast %214 : vector<1x16x8xbf16> to vector<16x8xbf16>
    %cst_143 = arith.constant dense<0.000000e+00> : vector<16x8xf32>
    %216 = tpu.matmul %213, %215, %cst_143 {dimension_numbers = #tpu.dot_dimension_numbers<[1], [0], [0], [1], [0, 0, 1, 1], [], []>} : vector<16x16xbf16>, vector<16x8xbf16>, vector<16x8xf32> -> vector<16x8xf32>
    %217 = arith.addf %211, %216 : vector<16x8xf32>
    %218 = vector.extract_strided_slice %56 {offsets = [33, 0, 0], sizes = [1, 16, 16], strides = [1, 1, 1]} : vector<64x16x16xbf16> to vector<1x16x16xbf16>
    %219 = vector.shape_cast %218 : vector<1x16x16xbf16> to vector<16x16xbf16>
    %c27 = arith.constant 27 : index
    %c0_144 = arith.constant 0 : index
    %c0_145 = arith.constant 0 : index
    %220 = vector.load %arg3[%c27, %c0_144, %c0_145] : memref<49x16x8xbf16, #tpu.memory_space<vmem>>, vector<1x16x8xbf16>
    %221 = vector.shape_cast %220 : vector<1x16x8xbf16> to vector<16x8xbf16>
    %cst_146 = arith.constant dense<0.000000e+00> : vector<16x8xf32>
    %222 = tpu.matmul %219, %221, %cst_146 {dimension_numbers = #tpu.dot_dimension_numbers<[1], [0], [0], [1], [0, 0, 1, 1], [], []>} : vector<16x16xbf16>, vector<16x8xbf16>, vector<16x8xf32> -> vector<16x8xf32>
    %223 = arith.addf %217, %222 : vector<16x8xf32>
    %224 = vector.extract_strided_slice %56 {offsets = [36, 0, 0], sizes = [1, 16, 16], strides = [1, 1, 1]} : vector<64x16x16xbf16> to vector<1x16x16xbf16>
    %225 = vector.shape_cast %224 : vector<1x16x16xbf16> to vector<16x16xbf16>
    %c28 = arith.constant 28 : index
    %c0_147 = arith.constant 0 : index
    %c0_148 = arith.constant 0 : index
    %226 = vector.load %arg3[%c28, %c0_147, %c0_148] : memref<49x16x8xbf16, #tpu.memory_space<vmem>>, vector<1x16x8xbf16>
    %227 = vector.shape_cast %226 : vector<1x16x8xbf16> to vector<16x8xbf16>
    %cst_149 = arith.constant dense<0.000000e+00> : vector<16x8xf32>
    %228 = tpu.matmul %225, %227, %cst_149 {dimension_numbers = #tpu.dot_dimension_numbers<[1], [0], [0], [1], [0, 0, 1, 1], [], []>} : vector<16x16xbf16>, vector<16x8xbf16>, vector<16x8xf32> -> vector<16x8xf32>
    %229 = arith.addf %223, %228 : vector<16x8xf32>
    %230 = vector.extract_strided_slice %56 {offsets = [37, 0, 0], sizes = [1, 16, 16], strides = [1, 1, 1]} : vector<64x16x16xbf16> to vector<1x16x16xbf16>
    %231 = vector.shape_cast %230 : vector<1x16x16xbf16> to vector<16x16xbf16>
    %c29 = arith.constant 29 : index
    %c0_150 = arith.constant 0 : index
    %c0_151 = arith.constant 0 : index
    %232 = vector.load %arg3[%c29, %c0_150, %c0_151] : memref<49x16x8xbf16, #tpu.memory_space<vmem>>, vector<1x16x8xbf16>
    %233 = vector.shape_cast %232 : vector<1x16x8xbf16> to vector<16x8xbf16>
    %cst_152 = arith.constant dense<0.000000e+00> : vector<16x8xf32>
    %234 = tpu.matmul %231, %233, %cst_152 {dimension_numbers = #tpu.dot_dimension_numbers<[1], [0], [0], [1], [0, 0, 1, 1], [], []>} : vector<16x16xbf16>, vector<16x8xbf16>, vector<16x8xf32> -> vector<16x8xf32>
    %235 = arith.addf %229, %234 : vector<16x8xf32>
    %236 = vector.extract_strided_slice %56 {offsets = [38, 0, 0], sizes = [1, 16, 16], strides = [1, 1, 1]} : vector<64x16x16xbf16> to vector<1x16x16xbf16>
    %237 = vector.shape_cast %236 : vector<1x16x16xbf16> to vector<16x16xbf16>
    %c30 = arith.constant 30 : index
    %c0_153 = arith.constant 0 : index
    %c0_154 = arith.constant 0 : index
    %238 = vector.load %arg3[%c30, %c0_153, %c0_154] : memref<49x16x8xbf16, #tpu.memory_space<vmem>>, vector<1x16x8xbf16>
    %239 = vector.shape_cast %238 : vector<1x16x8xbf16> to vector<16x8xbf16>
    %cst_155 = arith.constant dense<0.000000e+00> : vector<16x8xf32>
    %240 = tpu.matmul %237, %239, %cst_155 {dimension_numbers = #tpu.dot_dimension_numbers<[1], [0], [0], [1], [0, 0, 1, 1], [], []>} : vector<16x16xbf16>, vector<16x8xbf16>, vector<16x8xf32> -> vector<16x8xf32>
    %241 = arith.addf %235, %240 : vector<16x8xf32>
    %242 = vector.extract_strided_slice %56 {offsets = [39, 0, 0], sizes = [1, 16, 16], strides = [1, 1, 1]} : vector<64x16x16xbf16> to vector<1x16x16xbf16>
    %243 = vector.shape_cast %242 : vector<1x16x16xbf16> to vector<16x16xbf16>
    %c31 = arith.constant 31 : index
    %c0_156 = arith.constant 0 : index
    %c0_157 = arith.constant 0 : index
    %244 = vector.load %arg3[%c31, %c0_156, %c0_157] : memref<49x16x8xbf16, #tpu.memory_space<vmem>>, vector<1x16x8xbf16>
    %245 = vector.shape_cast %244 : vector<1x16x8xbf16> to vector<16x8xbf16>
    %cst_158 = arith.constant dense<0.000000e+00> : vector<16x8xf32>
    %246 = tpu.matmul %243, %245, %cst_158 {dimension_numbers = #tpu.dot_dimension_numbers<[1], [0], [0], [1], [0, 0, 1, 1], [], []>} : vector<16x16xbf16>, vector<16x8xbf16>, vector<16x8xf32> -> vector<16x8xf32>
    %247 = arith.addf %241, %246 : vector<16x8xf32>
    %248 = vector.extract_strided_slice %56 {offsets = [40, 0, 0], sizes = [1, 16, 16], strides = [1, 1, 1]} : vector<64x16x16xbf16> to vector<1x16x16xbf16>
    %249 = vector.shape_cast %248 : vector<1x16x16xbf16> to vector<16x16xbf16>
    %c32 = arith.constant 32 : index
    %c0_159 = arith.constant 0 : index
    %c0_160 = arith.constant 0 : index
    %250 = vector.load %arg3[%c32, %c0_159, %c0_160] : memref<49x16x8xbf16, #tpu.memory_space<vmem>>, vector<1x16x8xbf16>
    %251 = vector.shape_cast %250 : vector<1x16x8xbf16> to vector<16x8xbf16>
    %cst_161 = arith.constant dense<0.000000e+00> : vector<16x8xf32>
    %252 = tpu.matmul %249, %251, %cst_161 {dimension_numbers = #tpu.dot_dimension_numbers<[1], [0], [0], [1], [0, 0, 1, 1], [], []>} : vector<16x16xbf16>, vector<16x8xbf16>, vector<16x8xf32> -> vector<16x8xf32>
    %253 = arith.addf %247, %252 : vector<16x8xf32>
    %254 = vector.extract_strided_slice %56 {offsets = [41, 0, 0], sizes = [1, 16, 16], strides = [1, 1, 1]} : vector<64x16x16xbf16> to vector<1x16x16xbf16>
    %255 = vector.shape_cast %254 : vector<1x16x16xbf16> to vector<16x16xbf16>
    %c33 = arith.constant 33 : index
    %c0_162 = arith.constant 0 : index
    %c0_163 = arith.constant 0 : index
    %256 = vector.load %arg3[%c33, %c0_162, %c0_163] : memref<49x16x8xbf16, #tpu.memory_space<vmem>>, vector<1x16x8xbf16>
    %257 = vector.shape_cast %256 : vector<1x16x8xbf16> to vector<16x8xbf16>
    %cst_164 = arith.constant dense<0.000000e+00> : vector<16x8xf32>
    %258 = tpu.matmul %255, %257, %cst_164 {dimension_numbers = #tpu.dot_dimension_numbers<[1], [0], [0], [1], [0, 0, 1, 1], [], []>} : vector<16x16xbf16>, vector<16x8xbf16>, vector<16x8xf32> -> vector<16x8xf32>
    %259 = arith.addf %253, %258 : vector<16x8xf32>
    %260 = vector.extract_strided_slice %56 {offsets = [42, 0, 0], sizes = [1, 16, 16], strides = [1, 1, 1]} : vector<64x16x16xbf16> to vector<1x16x16xbf16>
    %261 = vector.shape_cast %260 : vector<1x16x16xbf16> to vector<16x16xbf16>
    %c34 = arith.constant 34 : index
    %c0_165 = arith.constant 0 : index
    %c0_166 = arith.constant 0 : index
    %262 = vector.load %arg3[%c34, %c0_165, %c0_166] : memref<49x16x8xbf16, #tpu.memory_space<vmem>>, vector<1x16x8xbf16>
    %263 = vector.shape_cast %262 : vector<1x16x8xbf16> to vector<16x8xbf16>
    %cst_167 = arith.constant dense<0.000000e+00> : vector<16x8xf32>
    %264 = tpu.matmul %261, %263, %cst_167 {dimension_numbers = #tpu.dot_dimension_numbers<[1], [0], [0], [1], [0, 0, 1, 1], [], []>} : vector<16x16xbf16>, vector<16x8xbf16>, vector<16x8xf32> -> vector<16x8xf32>
    %265 = arith.addf %259, %264 : vector<16x8xf32>
    %266 = vector.extract_strided_slice %56 {offsets = [45, 0, 0], sizes = [1, 16, 16], strides = [1, 1, 1]} : vector<64x16x16xbf16> to vector<1x16x16xbf16>
    %267 = vector.shape_cast %266 : vector<1x16x16xbf16> to vector<16x16xbf16>
    %c35 = arith.constant 35 : index
    %c0_168 = arith.constant 0 : index
    %c0_169 = arith.constant 0 : index
    %268 = vector.load %arg3[%c35, %c0_168, %c0_169] : memref<49x16x8xbf16, #tpu.memory_space<vmem>>, vector<1x16x8xbf16>
    %269 = vector.shape_cast %268 : vector<1x16x8xbf16> to vector<16x8xbf16>
    %cst_170 = arith.constant dense<0.000000e+00> : vector<16x8xf32>
    %270 = tpu.matmul %267, %269, %cst_170 {dimension_numbers = #tpu.dot_dimension_numbers<[1], [0], [0], [1], [0, 0, 1, 1], [], []>} : vector<16x16xbf16>, vector<16x8xbf16>, vector<16x8xf32> -> vector<16x8xf32>
    %271 = arith.addf %265, %270 : vector<16x8xf32>
    %272 = vector.extract_strided_slice %56 {offsets = [46, 0, 0], sizes = [1, 16, 16], strides = [1, 1, 1]} : vector<64x16x16xbf16> to vector<1x16x16xbf16>
    %273 = vector.shape_cast %272 : vector<1x16x16xbf16> to vector<16x16xbf16>
    %c36 = arith.constant 36 : index
    %c0_171 = arith.constant 0 : index
    %c0_172 = arith.constant 0 : index
    %274 = vector.load %arg3[%c36, %c0_171, %c0_172] : memref<49x16x8xbf16, #tpu.memory_space<vmem>>, vector<1x16x8xbf16>
    %275 = vector.shape_cast %274 : vector<1x16x8xbf16> to vector<16x8xbf16>
    %cst_173 = arith.constant dense<0.000000e+00> : vector<16x8xf32>
    %276 = tpu.matmul %273, %275, %cst_173 {dimension_numbers = #tpu.dot_dimension_numbers<[1], [0], [0], [1], [0, 0, 1, 1], [], []>} : vector<16x16xbf16>, vector<16x8xbf16>, vector<16x8xf32> -> vector<16x8xf32>
    %277 = arith.addf %271, %276 : vector<16x8xf32>
    %278 = vector.extract_strided_slice %56 {offsets = [47, 0, 0], sizes = [1, 16, 16], strides = [1, 1, 1]} : vector<64x16x16xbf16> to vector<1x16x16xbf16>
    %279 = vector.shape_cast %278 : vector<1x16x16xbf16> to vector<16x16xbf16>
    %c37 = arith.constant 37 : index
    %c0_174 = arith.constant 0 : index
    %c0_175 = arith.constant 0 : index
    %280 = vector.load %arg3[%c37, %c0_174, %c0_175] : memref<49x16x8xbf16, #tpu.memory_space<vmem>>, vector<1x16x8xbf16>
    %281 = vector.shape_cast %280 : vector<1x16x8xbf16> to vector<16x8xbf16>
    %cst_176 = arith.constant dense<0.000000e+00> : vector<16x8xf32>
    %282 = tpu.matmul %279, %281, %cst_176 {dimension_numbers = #tpu.dot_dimension_numbers<[1], [0], [0], [1], [0, 0, 1, 1], [], []>} : vector<16x16xbf16>, vector<16x8xbf16>, vector<16x8xf32> -> vector<16x8xf32>
    %283 = arith.addf %277, %282 : vector<16x8xf32>
    %284 = vector.extract_strided_slice %56 {offsets = [48, 0, 0], sizes = [1, 16, 16], strides = [1, 1, 1]} : vector<64x16x16xbf16> to vector<1x16x16xbf16>
    %285 = vector.shape_cast %284 : vector<1x16x16xbf16> to vector<16x16xbf16>
    %c38 = arith.constant 38 : index
    %c0_177 = arith.constant 0 : index
    %c0_178 = arith.constant 0 : index
    %286 = vector.load %arg3[%c38, %c0_177, %c0_178] : memref<49x16x8xbf16, #tpu.memory_space<vmem>>, vector<1x16x8xbf16>
    %287 = vector.shape_cast %286 : vector<1x16x8xbf16> to vector<16x8xbf16>
    %cst_179 = arith.constant dense<0.000000e+00> : vector<16x8xf32>
    %288 = tpu.matmul %285, %287, %cst_179 {dimension_numbers = #tpu.dot_dimension_numbers<[1], [0], [0], [1], [0, 0, 1, 1], [], []>} : vector<16x16xbf16>, vector<16x8xbf16>, vector<16x8xf32> -> vector<16x8xf32>
    %289 = arith.addf %283, %288 : vector<16x8xf32>
    %290 = vector.extract_strided_slice %56 {offsets = [49, 0, 0], sizes = [1, 16, 16], strides = [1, 1, 1]} : vector<64x16x16xbf16> to vector<1x16x16xbf16>
    %291 = vector.shape_cast %290 : vector<1x16x16xbf16> to vector<16x16xbf16>
    %c39 = arith.constant 39 : index
    %c0_180 = arith.constant 0 : index
    %c0_181 = arith.constant 0 : index
    %292 = vector.load %arg3[%c39, %c0_180, %c0_181] : memref<49x16x8xbf16, #tpu.memory_space<vmem>>, vector<1x16x8xbf16>
    %293 = vector.shape_cast %292 : vector<1x16x8xbf16> to vector<16x8xbf16>
    %cst_182 = arith.constant dense<0.000000e+00> : vector<16x8xf32>
    %294 = tpu.matmul %291, %293, %cst_182 {dimension_numbers = #tpu.dot_dimension_numbers<[1], [0], [0], [1], [0, 0, 1, 1], [], []>} : vector<16x16xbf16>, vector<16x8xbf16>, vector<16x8xf32> -> vector<16x8xf32>
    %295 = arith.addf %289, %294 : vector<16x8xf32>
    %296 = vector.extract_strided_slice %56 {offsets = [50, 0, 0], sizes = [1, 16, 16], strides = [1, 1, 1]} : vector<64x16x16xbf16> to vector<1x16x16xbf16>
    %297 = vector.shape_cast %296 : vector<1x16x16xbf16> to vector<16x16xbf16>
    %c40 = arith.constant 40 : index
    %c0_183 = arith.constant 0 : index
    %c0_184 = arith.constant 0 : index
    %298 = vector.load %arg3[%c40, %c0_183, %c0_184] : memref<49x16x8xbf16, #tpu.memory_space<vmem>>, vector<1x16x8xbf16>
    %299 = vector.shape_cast %298 : vector<1x16x8xbf16> to vector<16x8xbf16>
    %cst_185 = arith.constant dense<0.000000e+00> : vector<16x8xf32>
    %300 = tpu.matmul %297, %299, %cst_185 {dimension_numbers = #tpu.dot_dimension_numbers<[1], [0], [0], [1], [0, 0, 1, 1], [], []>} : vector<16x16xbf16>, vector<16x8xbf16>, vector<16x8xf32> -> vector<16x8xf32>
    %301 = arith.addf %295, %300 : vector<16x8xf32>
    %302 = vector.extract_strided_slice %56 {offsets = [51, 0, 0], sizes = [1, 16, 16], strides = [1, 1, 1]} : vector<64x16x16xbf16> to vector<1x16x16xbf16>
    %303 = vector.shape_cast %302 : vector<1x16x16xbf16> to vector<16x16xbf16>
    %c41 = arith.constant 41 : index
    %c0_186 = arith.constant 0 : index
    %c0_187 = arith.constant 0 : index
    %304 = vector.load %arg3[%c41, %c0_186, %c0_187] : memref<49x16x8xbf16, #tpu.memory_space<vmem>>, vector<1x16x8xbf16>
    %305 = vector.shape_cast %304 : vector<1x16x8xbf16> to vector<16x8xbf16>
    %cst_188 = arith.constant dense<0.000000e+00> : vector<16x8xf32>
    %306 = tpu.matmul %303, %305, %cst_188 {dimension_numbers = #tpu.dot_dimension_numbers<[1], [0], [0], [1], [0, 0, 1, 1], [], []>} : vector<16x16xbf16>, vector<16x8xbf16>, vector<16x8xf32> -> vector<16x8xf32>
    %307 = arith.addf %301, %306 : vector<16x8xf32>
    %308 = vector.extract_strided_slice %56 {offsets = [54, 0, 0], sizes = [1, 16, 16], strides = [1, 1, 1]} : vector<64x16x16xbf16> to vector<1x16x16xbf16>
    %309 = vector.shape_cast %308 : vector<1x16x16xbf16> to vector<16x16xbf16>
    %c42 = arith.constant 42 : index
    %c0_189 = arith.constant 0 : index
    %c0_190 = arith.constant 0 : index
    %310 = vector.load %arg3[%c42, %c0_189, %c0_190] : memref<49x16x8xbf16, #tpu.memory_space<vmem>>, vector<1x16x8xbf16>
    %311 = vector.shape_cast %310 : vector<1x16x8xbf16> to vector<16x8xbf16>
    %cst_191 = arith.constant dense<0.000000e+00> : vector<16x8xf32>
    %312 = tpu.matmul %309, %311, %cst_191 {dimension_numbers = #tpu.dot_dimension_numbers<[1], [0], [0], [1], [0, 0, 1, 1], [], []>} : vector<16x16xbf16>, vector<16x8xbf16>, vector<16x8xf32> -> vector<16x8xf32>
    %313 = arith.addf %307, %312 : vector<16x8xf32>
    %314 = vector.extract_strided_slice %56 {offsets = [55, 0, 0], sizes = [1, 16, 16], strides = [1, 1, 1]} : vector<64x16x16xbf16> to vector<1x16x16xbf16>
    %315 = vector.shape_cast %314 : vector<1x16x16xbf16> to vector<16x16xbf16>
    %c43 = arith.constant 43 : index
    %c0_192 = arith.constant 0 : index
    %c0_193 = arith.constant 0 : index
    %316 = vector.load %arg3[%c43, %c0_192, %c0_193] : memref<49x16x8xbf16, #tpu.memory_space<vmem>>, vector<1x16x8xbf16>
    %317 = vector.shape_cast %316 : vector<1x16x8xbf16> to vector<16x8xbf16>
    %cst_194 = arith.constant dense<0.000000e+00> : vector<16x8xf32>
    %318 = tpu.matmul %315, %317, %cst_194 {dimension_numbers = #tpu.dot_dimension_numbers<[1], [0], [0], [1], [0, 0, 1, 1], [], []>} : vector<16x16xbf16>, vector<16x8xbf16>, vector<16x8xf32> -> vector<16x8xf32>
    %319 = arith.addf %313, %318 : vector<16x8xf32>
    %320 = vector.extract_strided_slice %56 {offsets = [56, 0, 0], sizes = [1, 16, 16], strides = [1, 1, 1]} : vector<64x16x16xbf16> to vector<1x16x16xbf16>
    %321 = vector.shape_cast %320 : vector<1x16x16xbf16> to vector<16x16xbf16>
    %c44 = arith.constant 44 : index
    %c0_195 = arith.constant 0 : index
    %c0_196 = arith.constant 0 : index
    %322 = vector.load %arg3[%c44, %c0_195, %c0_196] : memref<49x16x8xbf16, #tpu.memory_space<vmem>>, vector<1x16x8xbf16>
    %323 = vector.shape_cast %322 : vector<1x16x8xbf16> to vector<16x8xbf16>
    %cst_197 = arith.constant dense<0.000000e+00> : vector<16x8xf32>
    %324 = tpu.matmul %321, %323, %cst_197 {dimension_numbers = #tpu.dot_dimension_numbers<[1], [0], [0], [1], [0, 0, 1, 1], [], []>} : vector<16x16xbf16>, vector<16x8xbf16>, vector<16x8xf32> -> vector<16x8xf32>
    %325 = arith.addf %319, %324 : vector<16x8xf32>
    %326 = vector.extract_strided_slice %56 {offsets = [57, 0, 0], sizes = [1, 16, 16], strides = [1, 1, 1]} : vector<64x16x16xbf16> to vector<1x16x16xbf16>
    %327 = vector.shape_cast %326 : vector<1x16x16xbf16> to vector<16x16xbf16>
    %c45 = arith.constant 45 : index
    %c0_198 = arith.constant 0 : index
    %c0_199 = arith.constant 0 : index
    %328 = vector.load %arg3[%c45, %c0_198, %c0_199] : memref<49x16x8xbf16, #tpu.memory_space<vmem>>, vector<1x16x8xbf16>
    %329 = vector.shape_cast %328 : vector<1x16x8xbf16> to vector<16x8xbf16>
    %cst_200 = arith.constant dense<0.000000e+00> : vector<16x8xf32>
    %330 = tpu.matmul %327, %329, %cst_200 {dimension_numbers = #tpu.dot_dimension_numbers<[1], [0], [0], [1], [0, 0, 1, 1], [], []>} : vector<16x16xbf16>, vector<16x8xbf16>, vector<16x8xf32> -> vector<16x8xf32>
    %331 = arith.addf %325, %330 : vector<16x8xf32>
    %332 = vector.extract_strided_slice %56 {offsets = [58, 0, 0], sizes = [1, 16, 16], strides = [1, 1, 1]} : vector<64x16x16xbf16> to vector<1x16x16xbf16>
    %333 = vector.shape_cast %332 : vector<1x16x16xbf16> to vector<16x16xbf16>
    %c46 = arith.constant 46 : index
    %c0_201 = arith.constant 0 : index
    %c0_202 = arith.constant 0 : index
    %334 = vector.load %arg3[%c46, %c0_201, %c0_202] : memref<49x16x8xbf16, #tpu.memory_space<vmem>>, vector<1x16x8xbf16>
    %335 = vector.shape_cast %334 : vector<1x16x8xbf16> to vector<16x8xbf16>
    %cst_203 = arith.constant dense<0.000000e+00> : vector<16x8xf32>
    %336 = tpu.matmul %333, %335, %cst_203 {dimension_numbers = #tpu.dot_dimension_numbers<[1], [0], [0], [1], [0, 0, 1, 1], [], []>} : vector<16x16xbf16>, vector<16x8xbf16>, vector<16x8xf32> -> vector<16x8xf32>
    %337 = arith.addf %331, %336 : vector<16x8xf32>
    %338 = vector.extract_strided_slice %56 {offsets = [59, 0, 0], sizes = [1, 16, 16], strides = [1, 1, 1]} : vector<64x16x16xbf16> to vector<1x16x16xbf16>
    %339 = vector.shape_cast %338 : vector<1x16x16xbf16> to vector<16x16xbf16>
    %c47 = arith.constant 47 : index
    %c0_204 = arith.constant 0 : index
    %c0_205 = arith.constant 0 : index
    %340 = vector.load %arg3[%c47, %c0_204, %c0_205] : memref<49x16x8xbf16, #tpu.memory_space<vmem>>, vector<1x16x8xbf16>
    %341 = vector.shape_cast %340 : vector<1x16x8xbf16> to vector<16x8xbf16>
    %cst_206 = arith.constant dense<0.000000e+00> : vector<16x8xf32>
    %342 = tpu.matmul %339, %341, %cst_206 {dimension_numbers = #tpu.dot_dimension_numbers<[1], [0], [0], [1], [0, 0, 1, 1], [], []>} : vector<16x16xbf16>, vector<16x8xbf16>, vector<16x8xf32> -> vector<16x8xf32>
    %343 = arith.addf %337, %342 : vector<16x8xf32>
    %344 = vector.extract_strided_slice %56 {offsets = [60, 0, 0], sizes = [1, 16, 16], strides = [1, 1, 1]} : vector<64x16x16xbf16> to vector<1x16x16xbf16>
    %345 = vector.shape_cast %344 : vector<1x16x16xbf16> to vector<16x16xbf16>
    %c48 = arith.constant 48 : index
    %c0_207 = arith.constant 0 : index
    %c0_208 = arith.constant 0 : index
    %346 = vector.load %arg3[%c48, %c0_207, %c0_208] : memref<49x16x8xbf16, #tpu.memory_space<vmem>>, vector<1x16x8xbf16>
    %347 = vector.shape_cast %346 : vector<1x16x8xbf16> to vector<16x8xbf16>
    %cst_209 = arith.constant dense<0.000000e+00> : vector<16x8xf32>
    %348 = tpu.matmul %345, %347, %cst_209 {dimension_numbers = #tpu.dot_dimension_numbers<[1], [0], [0], [1], [0, 0, 1, 1], [], []>} : vector<16x16xbf16>, vector<16x8xbf16>, vector<16x8xf32> -> vector<16x8xf32>
    %349 = arith.addf %343, %348 : vector<16x8xf32>
    %cst_210 = arith.constant 0.000000e+00 : f32
    %350 = vector.broadcast %cst_210 : f32 to vector<16x8xf32>
    %351 = arith.maximumf %349, %350 : vector<16x8xf32>
    %c0_211 = arith.constant 0 : index
    %c0_212 = arith.constant 0 : index
    %352 = vector.load %arg4[%c0_211, %c0_212] : memref<8x2xf32, #tpu.memory_space<vmem>>, vector<8x2xf32>
    %cst_213 = arith.constant dense<0.000000e+00> : vector<16x2xf32>
    %353 = tpu.matmul %351, %352, %cst_213 {dimension_numbers = #tpu.dot_dimension_numbers<[1], [0], [0], [1], [0, 0, 1, 1], [], []>} : vector<16x8xf32>, vector<8x2xf32>, vector<16x2xf32> -> vector<16x2xf32>
    %c0_214 = arith.constant 0 : index
    %c0_215 = arith.constant 0 : index
    %354 = vector.load %arg6[%c0_214, %c0_215] : memref<16x2xf32, #tpu.memory_space<vmem>>, vector<16x2xf32>
    tpu.vector_store %arg6[%c0_214, %c0_215], %353 {strides = array<i32>} : memref<16x2xf32, #tpu.memory_space<vmem>>, vector<16x2xf32>,
    %cst_216 = arith.constant dense<0xFF800000> : vector<16xf32>
    %355 = vector.multi_reduction <maximumf>, %353, %cst_216 [1] : vector<16x2xf32> to vector<16xf32>
    %356 = vector.shape_cast %355 : vector<16xf32> to vector<16x1xf32>
    %357 = vector.broadcast %356 : vector<16x1xf32> to vector<16x2xf32>
    %358 = arith.subf %353, %357 : vector<16x2xf32>
    %359 = math.exp %358 : vector<16x2xf32>
    %cst_217 = arith.constant dense<0.000000e+00> : vector<16xf32>
    %360 = vector.multi_reduction <add>, %359, %cst_217 [1] : vector<16x2xf32> to vector<16xf32>
    %361 = vector.shape_cast %360 : vector<16xf32> to vector<16x1xf32>
    %362 = math.log %361 : vector<16x1xf32>
    %363 = arith.addf %356, %362 : vector<16x1xf32>
    %364 = tpu.iota {dimensions = array<i32: 1>} : vector<16x2xi32>
    %c0_218 = arith.constant 0 : index
    %c0_219 = arith.constant 0 : index
    %365 = vector.load %arg5[%c0_218, %c0_219] : memref<16x1xi32, #tpu.memory_space<vmem>>, vector<16x1xi32>
    %366 = vector.broadcast %365 : vector<16x1xi32> to vector<16x2xi32>
    %367 = arith.cmpi eq, %364, %366 : vector<16x2xi32>
    %cst_220 = arith.constant 0.000000e+00 : f32
    %368 = vector.broadcast %cst_220 : f32 to vector<16x2xf32>
    %369 = arith.select %367, %353, %368 : vector<16x2xi1>, vector<16x2xf32>
    %cst_221 = arith.constant dense<0.000000e+00> : vector<16xf32>
    %370 = vector.multi_reduction <add>, %369, %cst_221 [1] : vector<16x2xf32> to vector<16xf32>
    %371 = vector.shape_cast %370 : vector<16xf32> to vector<16x1xf32>
    %c16_i32 = arith.constant 16 : i32
    %372 = arith.muli %arg0, %c16_i32 : i32
    %373 = tpu.iota {dimensions = array<i32: 0>} : vector<16x1xi32>
    %374 = vector.broadcast %372 : i32 to vector<16x1xi32>
    %375 = arith.addi %374, %373 : vector<16x1xi32>
    %c8_i32 = arith.constant 8 : i32
    %376 = vector.broadcast %c8_i32 : i32 to vector<16x1xi32>
    %377 = arith.cmpi slt, %375, %376 : vector<16x1xi32>
    %378 = arith.subf %363, %371 : vector<16x1xf32>
    %cst_222 = arith.constant 0.000000e+00 : f32
    %379 = vector.broadcast %cst_222 : f32 to vector<16x1xf32>
    %380 = arith.select %377, %378, %379 : vector<16x1xi1>, vector<16x1xf32>
    %c0_223 = arith.constant 0 : index
    %c0_224 = arith.constant 0 : index
    %381 = vector.load %arg7[%c0_223, %c0_224] : memref<16x1xf32, #tpu.memory_space<vmem>>, vector<16x1xf32>
    tpu.vector_store %arg7[%c0_223, %c0_224], %380 {strides = array<i32>} : memref<16x1xf32, #tpu.memory_space<vmem>>, vector<16x1xf32>,
    return
  }
  func.func @transform_0(%arg0: i32) -> (i32, i32, i32) {
    %c0_i32 = arith.constant 0 : i32
    %c0_i32_0 = arith.constant 0 : i32
    %c0_i32_1 = arith.constant 0 : i32
    return %c0_i32, %arg0, %c0_i32_0 : i32, i32, i32
  }
  func.func @transform_1(%arg0: i32) -> (i32, i32, i32) {
    %c0_i32 = arith.constant 0 : i32
    %c0_i32_0 = arith.constant 0 : i32
    %c0_i32_1 = arith.constant 0 : i32
    %c0_i32_2 = arith.constant 0 : i32
    return %c0_i32, %c0_i32_0, %c0_i32_1 : i32, i32, i32
  }
  func.func @transform_2(%arg0: i32) -> (i32, i32, i32) {
    %c0_i32 = arith.constant 0 : i32
    %c0_i32_0 = arith.constant 0 : i32
    %c0_i32_1 = arith.constant 0 : i32
    %c0_i32_2 = arith.constant 0 : i32
    return %c0_i32, %c0_i32_0, %c0_i32_1 : i32, i32, i32
  }
  func.func @transform_3(%arg0: i32) -> (i32, i32) {
    %c0_i32 = arith.constant 0 : i32
    %c0_i32_0 = arith.constant 0 : i32
    %c0_i32_1 = arith.constant 0 : i32
    return %c0_i32, %c0_i32_0 : i32, i32
  }
  func.func @transform_4(%arg0: i32) -> (i32, i32) {
    %c0_i32 = arith.constant 0 : i32
    %c0_i32_0 = arith.constant 0 : i32
    return %arg0, %c0_i32 : i32, i32
  }
  func.func @transform_5(%arg0: i32) -> (i32, i32) {
    %c0_i32 = arith.constant 0 : i32
    %c0_i32_0 = arith.constant 0 : i32
    return %arg0, %c0_i32 : i32, i32
  }
  func.func @transform_6(%arg0: i32) -> (i32, i32) {
    %c0_i32 = arith.constant 0 : i32
    %c0_i32_0 = arith.constant 0 : i32
    return %arg0, %c0_i32 : i32, i32
  }
}

</mosaic_0001>

<llo_original>
// kernel: tpu_custom_call.1
$region0: #{tpu_custom_call.1}
  #allocation0 [shape = 'u32[]', space=smem, size = 0x4, offset = 0x4, fixed_abs, tag = 'smem constant byte address 0x4 - core index']
  #allocation1 [shape = 'u32[144,128]{1,0:T(1,128)}', space=vmem, size = 0x12000, scoped, tag = 'internal scratch']
  %s0 = inlined_call_operand.vmem [shape: bf16[88,16,32], index: 0, kind: input, shape index: {}]
  %s1 = inlined_call_operand.vmem [shape: bf16[9,32,16], index: 1, kind: input, shape index: {}]
  %s2 = inlined_call_operand.vmem [shape: bf16[49,16,8], index: 2, kind: input, shape index: {}]
  %s3 = inlined_call_operand.vmem [shape: f32[8,2], index: 3, kind: input, shape index: {}]
  %s4 = inlined_call_operand.vmem [shape: s32[16,1], index: 4, kind: input, shape index: {}]
  %s5 = inlined_call_operand.vmem [shape: f32[16,2], index: 5, kind: output, shape index: {0}]
  %s6 = inlined_call_operand.vmem [shape: f32[16,1], index: 6, kind: output, shape index: {1}]
  %7 = xla_tuple %s5, %s6
  %s8 = sld [smem:[#allocation0]]
  $region38: #{tpu_custom_call.1} parent=0
    _
  %s10 = ssub.s32 1, %s8
  %s11 = scalar_select 0, %s10, %s8
  // Predicated region
  $region2: #{tpu_custom_call.1} parent=0 // pred_check
    _
  $region3: #{tpu_custom_call.1} parent=0 // pred_check_branch
    %13 = sbr.rel (0) target = $region5
  $region4: #{tpu_custom_call.1} parent=0 // pred_region
    _
  $region5: #{tpu_custom_call.1} parent=0 // pred_fallthru
    _
  // Predicated region
  $region6: #{tpu_custom_call.1} parent=0 // pred_check
    _
  $region7: #{tpu_custom_call.1} parent=0 // pred_check_branch
    %15 = sbr.rel (0) target = $region9
  $region8: #{tpu_custom_call.1} parent=0 // pred_region
    _
  $region9: #{tpu_custom_call.1} parent=0 // pred_fallthru
    _
  // Predicated region
  $region10: #{tpu_custom_call.1} parent=0 // pred_check
    _
  $region11: #{tpu_custom_call.1} parent=0 // pred_check_branch
    %17 = sbr.rel (0) target = $region13
  $region12: #{tpu_custom_call.1} parent=0 // pred_region
    _
  $region13: #{tpu_custom_call.1} parent=0 // pred_fallthru
    _
  // Predicated region
  $region14: #{tpu_custom_call.1} parent=0 // pred_check
    _
  $region15: #{tpu_custom_call.1} parent=0 // pred_check_branch
    %19 = sbr.rel (0) target = $region17
  $region16: #{tpu_custom_call.1} parent=0 // pred_region
    _
  $region17: #{tpu_custom_call.1} parent=0 // pred_fallthru
    _
  // Predicated region
  $region18: #{tpu_custom_call.1} parent=0 // pred_check
    _
  $region19: #{tpu_custom_call.1} parent=0 // pred_check_branch
    %21 = sbr.rel (0) target = $region21
  $region20: #{tpu_custom_call.1} parent=0 // pred_region
    _
  $region21: #{tpu_custom_call.1} parent=0 // pred_fallthru
    _
  %v23 = vld [vmem:[%s0] sm:$0xf]
  %v24 = vld [vmem:[%s0 + $0x4] sm:$0xf]
  %v25 = vld [vmem:[%s0 + $0x8] sm:$0xf]
  %v26 = vld [vmem:[%s0 + $0xc] sm:$0xf]
  %v27 = vld [vmem:[%s0 + $0x10] sm:$0xf]
  %v28 = vld [vmem:[%s0 + $0x14] sm:$0xf]
  %v29 = vld [vmem:[%s0 + $0x18] sm:$0xf]
  %v30 = vld [vmem:[%s0 + $0x1c] sm:$0xf]
  %v31 = vld [vmem:[%s0 + $0x20] sm:$0xf]
  %v32 = vld [vmem:[%s0 + $0x24] sm:$0xf]
  %v33 = vld [vmem:[%s0 + $0x28] sm:$0xf]
  %v34 = vld [vmem:[%s0 + $0x2c] sm:$0xf]
  %v35 = vld [vmem:[%s0 + $0x30] sm:$0xf]
  %v36 = vld [vmem:[%s0 + $0x34] sm:$0xf]
  %v37 = vld [vmem:[%s0 + $0x38] sm:$0xf]
  %v38 = vld [vmem:[%s0 + $0x3c] sm:$0xf]
  %v39 = vld [vmem:[%s0 + $0x40] sm:$0xf]
  %v40 = vld [vmem:[%s0 + $0x44] sm:$0xf]
  %v41 = vld [vmem:[%s0 + $0x48] sm:$0xf]
  %v42 = vld [vmem:[%s0 + $0x4c] sm:$0xf]
  %v43 = vld [vmem:[%s0 + $0x50] sm:$0xf]
  %v44 = vld [vmem:[%s0 + $0x54] sm:$0xf]
  %v45 = vld [vmem:[%s0 + $0x58] sm:$0xf]
  %v46 = vld [vmem:[%s0 + $0x5c] sm:$0xf]
  %v47 = vld [vmem:[%s0 + $0x60] sm:$0xf]
  %v48 = vld [vmem:[%s0 + $0x64] sm:$0xf]
  %v49 = vld [vmem:[%s0 + $0x68] sm:$0xf]
  %v50 = vld [vmem:[%s0 + $0x6c] sm:$0xf]
  %v51 = vld [vmem:[%s0 + $0x70] sm:$0xf]
  %v52 = vld [vmem:[%s0 + $0x74] sm:$0xf]
  %v53 = vld [vmem:[%s0 + $0x78] sm:$0xf]
  %v54 = vld [vmem:[%s0 + $0x7c] sm:$0xf]
  %v55 = vld [vmem:[%s0 + $0x80] sm:$0xf]
  %v56 = vld [vmem:[%s0 + $0x84] sm:$0xf]
  %v57 = vld [vmem:[%s0 + $0x88] sm:$0xf]
  %v58 = vld [vmem:[%s0 + $0x8c] sm:$0xf]
  %v59 = vld [vmem:[%s0 + $0x90] sm:$0xf]
  %v60 = vld [vmem:[%s0 + $0x94] sm:$0xf]
  %v61 = vld [vmem:[%s0 + $0x98] sm:$0xf]
  %v62 = vld [vmem:[%s0 + $0x9c] sm:$0xf]
  %v63 = vld [vmem:[%s0 + $0xa0] sm:$0xf]
  %v64 = vld [vmem:[%s0 + $0xa4] sm:$0xf]
  %v65 = vld [vmem:[%s0 + $0xa8] sm:$0xf]
  %v66 = vld [vmem:[%s0 + $0xac] sm:$0xf]
  %v67 = vld [vmem:[%s0 + $0xb0] sm:$0xf]
  %v68 = vld [vmem:[%s0 + $0xb4] sm:$0xf]
  %v69 = vld [vmem:[%s0 + $0xb8] sm:$0xf]
  %v70 = vld [vmem:[%s0 + $0xbc] sm:$0xf]
  %v71 = vld [vmem:[%s0 + $0xc0] sm:$0xf]
  %v72 = vld [vmem:[%s0 + $0xc4] sm:$0xf]
  %v73 = vld [vmem:[%s0 + $0xc8] sm:$0xf]
  %v74 = vld [vmem:[%s0 + $0xcc] sm:$0xf]
  %v75 = vld [vmem:[%s0 + $0xd0] sm:$0xf]
  %v76 = vld [vmem:[%s0 + $0xd4] sm:$0xf]
  %v77 = vld [vmem:[%s0 + $0xd8] sm:$0xf]
  %v78 = vld [vmem:[%s0 + $0xdc] sm:$0xf]
  %v79 = vld [vmem:[%s0 + $0xe0] sm:$0xf]
  %v80 = vld [vmem:[%s0 + $0xe4] sm:$0xf]
  %v81 = vld [vmem:[%s0 + $0xe8] sm:$0xf]
  %v82 = vld [vmem:[%s0 + $0xec] sm:$0xf]
  %v83 = vld [vmem:[%s0 + $0xf0] sm:$0xf]
  %v84 = vld [vmem:[%s0 + $0xf4] sm:$0xf]
  %v85 = vld [vmem:[%s0 + $0xf8] sm:$0xf]
  %v86 = vld [vmem:[%s0 + $0xfc] sm:$0xf]
  %v87 = vld [vmem:[%s0 + $0x100] sm:$0xf]
  %v88 = vld [vmem:[%s0 + $0x104] sm:$0xf]
  %v89 = vld [vmem:[%s0 + $0x108] sm:$0xf]
  %v90 = vld [vmem:[%s0 + $0x10c] sm:$0xf]
  %v91 = vld [vmem:[%s0 + $0x110] sm:$0xf]
  %v92 = vld [vmem:[%s0 + $0x114] sm:$0xf]
  %v93 = vld [vmem:[%s0 + $0x118] sm:$0xf]
  %v94 = vld [vmem:[%s0 + $0x11c] sm:$0xf]
  %v95 = vld [vmem:[%s0 + $0x120] sm:$0xf]
  %v96 = vld [vmem:[%s0 + $0x124] sm:$0xf]
  %v97 = vld [vmem:[%s0 + $0x128] sm:$0xf]
  %v98 = vld [vmem:[%s0 + $0x12c] sm:$0xf]
  %v99 = vld [vmem:[%s0 + $0x130] sm:$0xf]
  %v100 = vld [vmem:[%s0 + $0x134] sm:$0xf]
  %v101 = vld [vmem:[%s0 + $0x138] sm:$0xf]
  %v102 = vld [vmem:[%s0 + $0x13c] sm:$0xf]
  %v103 = vld [vmem:[%s0 + $0x140] sm:$0xf]
  %v104 = vld [vmem:[%s0 + $0x144] sm:$0xf]
  %v105 = vld [vmem:[%s0 + $0x148] sm:$0xf]
  %v106 = vld [vmem:[%s0 + $0x14c] sm:$0xf]
  %v107 = vld [vmem:[%s0 + $0x150] sm:$0xf]
  %v108 = vld [vmem:[%s0 + $0x154] sm:$0xf]
  %v109 = vld [vmem:[%s0 + $0x158] sm:$0xf]
  %v110 = vld [vmem:[%s0 + $0x15c] sm:$0xf]
  %v111 = vld [vmem:[%s0 + $0x160] sm:$0xf]
  %v112 = vld [vmem:[%s0 + $0x164] sm:$0xf]
  %v113 = vld [vmem:[%s0 + $0x168] sm:$0xf]
  %v114 = vld [vmem:[%s0 + $0x16c] sm:$0xf]
  %v115 = vld [vmem:[%s0 + $0x170] sm:$0xf]
  %v116 = vld [vmem:[%s0 + $0x174] sm:$0xf]
  %v117 = vld [vmem:[%s0 + $0x178] sm:$0xf]
  %v118 = vld [vmem:[%s0 + $0x17c] sm:$0xf]
  %v119 = vld [vmem:[%s0 + $0x180] sm:$0xf]
  %v120 = vld [vmem:[%s0 + $0x184] sm:$0xf]
  %v121 = vld [vmem:[%s0 + $0x188] sm:$0xf]
  %v122 = vld [vmem:[%s0 + $0x18c] sm:$0xf]
  %v123 = vld [vmem:[%s0 + $0x190] sm:$0xf]
  %v124 = vld [vmem:[%s0 + $0x194] sm:$0xf]
  %v125 = vld [vmem:[%s0 + $0x198] sm:$0xf]
  %v126 = vld [vmem:[%s0 + $0x19c] sm:$0xf]
  %v127 = vld [vmem:[%s0 + $0x1a0] sm:$0xf]
  %v128 = vld [vmem:[%s0 + $0x1a4] sm:$0xf]
  %v129 = vld [vmem:[%s0 + $0x1a8] sm:$0xf]
  %v130 = vld [vmem:[%s0 + $0x1ac] sm:$0xf]
  %v131 = vld [vmem:[%s0 + $0x1b0] sm:$0xf]
  %v132 = vld [vmem:[%s0 + $0x1b4] sm:$0xf]
  %v133 = vld [vmem:[%s0 + $0x1b8] sm:$0xf]
  %v134 = vld [vmem:[%s0 + $0x1bc] sm:$0xf]
  %v135 = vld [vmem:[%s0 + $0x1c0] sm:$0xf]
  %v136 = vld [vmem:[%s0 + $0x1c4] sm:$0xf]
  %v137 = vld [vmem:[%s0 + $0x1c8] sm:$0xf]
  %v138 = vld [vmem:[%s0 + $0x1cc] sm:$0xf]
  %v139 = vld [vmem:[%s0 + $0x1d0] sm:$0xf]
  %v140 = vld [vmem:[%s0 + $0x1d4] sm:$0xf]
  %v141 = vld [vmem:[%s0 + $0x1d8] sm:$0xf]
  %v142 = vld [vmem:[%s0 + $0x1dc] sm:$0xf]
  %v143 = vld [vmem:[%s0 + $0x1e0] sm:$0xf]
  %v144 = vld [vmem:[%s0 + $0x1e4] sm:$0xf]
  %v145 = vld [vmem:[%s0 + $0x1e8] sm:$0xf]
  %v146 = vld [vmem:[%s0 + $0x1ec] sm:$0xf]
  %v147 = vld [vmem:[%s0 + $0x1f0] sm:$0xf]
  %v148 = vld [vmem:[%s0 + $0x1f4] sm:$0xf]
  %v149 = vld [vmem:[%s0 + $0x1f8] sm:$0xf]
  %v150 = vld [vmem:[%s0 + $0x1fc] sm:$0xf]
  %v151 = vld [vmem:[%s1] sm:$0xf]
  %v152 = vld [vmem:[%s1 + $0x4] sm:$0xf]
  %v153 = vld [vmem:[%s1 + $0x8] sm:$0xf]
  %v154 = vld [vmem:[%s1 + $0xc] sm:$0xf]
  %s155 = scalar_lea.vmem %s0, 8
  %v156 = vld [vmem:[%s155] sm:$0xf]
  %v157 = vld [vmem:[%s155 + $0x4] sm:$0xf]
  %v158 = vld [vmem:[%s155 + $0x8] sm:$0xf]
  %v159 = vld [vmem:[%s155 + $0xc] sm:$0xf]
  %v160 = vld [vmem:[%s155 + $0x10] sm:$0xf]
  %v161 = vld [vmem:[%s155 + $0x14] sm:$0xf]
  %v162 = vld [vmem:[%s155 + $0x18] sm:$0xf]
  %v163 = vld [vmem:[%s155 + $0x1c] sm:$0xf]
  %v164 = vld [vmem:[%s155 + $0x20] sm:$0xf]
  %v165 = vld [vmem:[%s155 + $0x24] sm:$0xf]
  %v166 = vld [vmem:[%s155 + $0x28] sm:$0xf]
  %v167 = vld [vmem:[%s155 + $0x2c] sm:$0xf]
  %v168 = vld [vmem:[%s155 + $0x30] sm:$0xf]
  %v169 = vld [vmem:[%s155 + $0x34] sm:$0xf]
  %v170 = vld [vmem:[%s155 + $0x38] sm:$0xf]
  %v171 = vld [vmem:[%s155 + $0x3c] sm:$0xf]
  %v172 = vld [vmem:[%s155 + $0x40] sm:$0xf]
  %v173 = vld [vmem:[%s155 + $0x44] sm:$0xf]
  %v174 = vld [vmem:[%s155 + $0x48] sm:$0xf]
  %v175 = vld [vmem:[%s155 + $0x4c] sm:$0xf]
  %v176 = vld [vmem:[%s155 + $0x50] sm:$0xf]
  %v177 = vld [vmem:[%s155 + $0x54] sm:$0xf]
  %v178 = vld [vmem:[%s155 + $0x58] sm:$0xf]
  %v179 = vld [vmem:[%s155 + $0x5c] sm:$0xf]
  %v180 = vld [vmem:[%s155 + $0x60] sm:$0xf]
  %v181 = vld [vmem:[%s155 + $0x64] sm:$0xf]
  %v182 = vld [vmem:[%s155 + $0x68] sm:$0xf]
  %v183 = vld [vmem:[%s155 + $0x6c] sm:$0xf]
  %v184 = vld [vmem:[%s155 + $0x70] sm:$0xf]
  %v185 = vld [vmem:[%s155 + $0x74] sm:$0xf]
  %v186 = vld [vmem:[%s155 + $0x78] sm:$0xf]
  %v187 = vld [vmem:[%s155 + $0x7c] sm:$0xf]
  %v188 = vld [vmem:[%s155 + $0x80] sm:$0xf]
  %v189 = vld [vmem:[%s155 + $0x84] sm:$0xf]
  %v190 = vld [vmem:[%s155 + $0x88] sm:$0xf]
  %v191 = vld [vmem:[%s155 + $0x8c] sm:$0xf]
  %v192 = vld [vmem:[%s155 + $0x90] sm:$0xf]
  %v193 = vld [vmem:[%s155 + $0x94] sm:$0xf]
  %v194 = vld [vmem:[%s155 + $0x98] sm:$0xf]
  %v195 = vld [vmem:[%s155 + $0x9c] sm:$0xf]
  %v196 = vld [vmem:[%s155 + $0xa0] sm:$0xf]
  %v197 = vld [vmem:[%s155 + $0xa4] sm:$0xf]
  %v198 = vld [vmem:[%s155 + $0xa8] sm:$0xf]
  %v199 = vld [vmem:[%s155 + $0xac] sm:$0xf]
  %v200 = vld [vmem:[%s155 + $0xb0] sm:$0xf]
  %v201 = vld [vmem:[%s155 + $0xb4] sm:$0xf]
  %v202 = vld [vmem:[%s155 + $0xb8] sm:$0xf]
  %v203 = vld [vmem:[%s155 + $0xbc] sm:$0xf]
  %v204 = vld [vmem:[%s155 + $0xc0] sm:$0xf]
  %v205 = vld [vmem:[%s155 + $0xc4] sm:$0xf]
  %v206 = vld [vmem:[%s155 + $0xc8] sm:$0xf]
  %v207 = vld [vmem:[%s155 + $0xcc] sm:$0xf]
  %v208 = vld [vmem:[%s155 + $0xd0] sm:$0xf]
  %v209 = vld [vmem:[%s155 + $0xd4] sm:$0xf]
  %v210 = vld [vmem:[%s155 + $0xd8] sm:$0xf]
  %v211 = vld [vmem:[%s155 + $0xdc] sm:$0xf]
  %v212 = vld [vmem:[%s155 + $0xe0] sm:$0xf]
  %v213 = vld [vmem:[%s155 + $0xe4] sm:$0xf]
  %v214 = vld [vmem:[%s155 + $0xe8] sm:$0xf]
  %v215 = vld [vmem:[%s155 + $0xec] sm:$0xf]
  %v216 = vld [vmem:[%s155 + $0xf0] sm:$0xf]
  %v217 = vld [vmem:[%s155 + $0xf4] sm:$0xf]
  %v218 = vld [vmem:[%s155 + $0xf8] sm:$0xf]
  %v219 = vld [vmem:[%s155 + $0xfc] sm:$0xf]
  %v220 = vld [vmem:[%s155 + $0x100] sm:$0xf]
  %v221 = vld [vmem:[%s155 + $0x104] sm:$0xf]
  %v222 = vld [vmem:[%s155 + $0x108] sm:$0xf]
  %v223 = vld [vmem:[%s155 + $0x10c] sm:$0xf]
  %v224 = vld [vmem:[%s155 + $0x110] sm:$0xf]
  %v225 = vld [vmem:[%s155 + $0x114] sm:$0xf]
  %v226 = vld [vmem:[%s155 + $0x118] sm:$0xf]
  %v227 = vld [vmem:[%s155 + $0x11c] sm:$0xf]
  %v228 = vld [vmem:[%s155 + $0x120] sm:$0xf]
  %v229 = vld [vmem:[%s155 + $0x124] sm:$0xf]
  %v230 = vld [vmem:[%s155 + $0x128] sm:$0xf]
  %v231 = vld [vmem:[%s155 + $0x12c] sm:$0xf]
  %v232 = vld [vmem:[%s155 + $0x130] sm:$0xf]
  %v233 = vld [vmem:[%s155 + $0x134] sm:$0xf]
  %v234 = vld [vmem:[%s155 + $0x138] sm:$0xf]
  %v235 = vld [vmem:[%s155 + $0x13c] sm:$0xf]
  %v236 = vld [vmem:[%s155 + $0x140] sm:$0xf]
  %v237 = vld [vmem:[%s155 + $0x144] sm:$0xf]
  %v238 = vld [vmem:[%s155 + $0x148] sm:$0xf]
  %v239 = vld [vmem:[%s155 + $0x14c] sm:$0xf]
  %v240 = vld [vmem:[%s155 + $0x150] sm:$0xf]
  %v241 = vld [vmem:[%s155 + $0x154] sm:$0xf]
  %v242 = vld [vmem:[%s155 + $0x158] sm:$0xf]
  %v243 = vld [vmem:[%s155 + $0x15c] sm:$0xf]
  %v244 = vld [vmem:[%s155 + $0x160] sm:$0xf]
  %v245 = vld [vmem:[%s155 + $0x164] sm:$0xf]
  %v246 = vld [vmem:[%s155 + $0x168] sm:$0xf]
  %v247 = vld [vmem:[%s155 + $0x16c] sm:$0xf]
  %v248 = vld [vmem:[%s155 + $0x170] sm:$0xf]
  %v249 = vld [vmem:[%s155 + $0x174] sm:$0xf]
  %v250 = vld [vmem:[%s155 + $0x178] sm:$0xf]
  %v251 = vld [vmem:[%s155 + $0x17c] sm:$0xf]
  %v252 = vld [vmem:[%s155 + $0x180] sm:$0xf]
  %v253 = vld [vmem:[%s155 + $0x184] sm:$0xf]
  %v254 = vld [vmem:[%s155 + $0x188] sm:$0xf]
  %v255 = vld [vmem:[%s155 + $0x18c] sm:$0xf]
  %v256 = vld [vmem:[%s155 + $0x190] sm:$0xf]
  %v257 = vld [vmem:[%s155 + $0x194] sm:$0xf]
  %v258 = vld [vmem:[%s155 + $0x198] sm:$0xf]
  %v259 = vld [vmem:[%s155 + $0x19c] sm:$0xf]
  %v260 = vld [vmem:[%s155 + $0x1a0] sm:$0xf]
  %v261 = vld [vmem:[%s155 + $0x1a4] sm:$0xf]
  %v262 = vld [vmem:[%s155 + $0x1a8] sm:$0xf]
  %v263 = vld [vmem:[%s155 + $0x1ac] sm:$0xf]
  %v264 = vld [vmem:[%s155 + $0x1b0] sm:$0xf]
  %v265 = vld [vmem:[%s155 + $0x1b4] sm:$0xf]
  %v266 = vld [vmem:[%s155 + $0x1b8] sm:$0xf]
  %v267 = vld [vmem:[%s155 + $0x1bc] sm:$0xf]
  %v268 = vld [vmem:[%s155 + $0x1c0] sm:$0xf]
  %v269 = vld [vmem:[%s155 + $0x1c4] sm:$0xf]
  %v270 = vld [vmem:[%s155 + $0x1c8] sm:$0xf]
  %v271 = vld [vmem:[%s155 + $0x1cc] sm:$0xf]
  %v272 = vld [vmem:[%s155 + $0x1d0] sm:$0xf]
  %v273 = vld [vmem:[%s155 + $0x1d4] sm:$0xf]
  %v274 = vld [vmem:[%s155 + $0x1d8] sm:$0xf]
  %v275 = vld [vmem:[%s155 + $0x1dc] sm:$0xf]
  %v276 = vld [vmem:[%s155 + $0x1e0] sm:$0xf]
  %v277 = vld [vmem:[%s155 + $0x1e4] sm:$0xf]
  %v278 = vld [vmem:[%s155 + $0x1e8] sm:$0xf]
  %v279 = vld [vmem:[%s155 + $0x1ec] sm:$0xf]
  %v280 = vld [vmem:[%s155 + $0x1f0] sm:$0xf]
  %v281 = vld [vmem:[%s155 + $0x1f4] sm:$0xf]
  %v282 = vld [vmem:[%s155 + $0x1f8] sm:$0xf]
  %v283 = vld [vmem:[%s155 + $0x1fc] sm:$0xf]
  %s284 = scalar_lea.vmem %s1, 16
  %v285 = vld [vmem:[%s284] sm:$0xf]
  %v286 = vld [vmem:[%s284 + $0x4] sm:$0xf]
  %v287 = vld [vmem:[%s284 + $0x8] sm:$0xf]
  %v288 = vld [vmem:[%s284 + $0xc] sm:$0xf]
  %v417 = vunpack.c.l.b16 %v156
  %v418 = vunpack.c.l.b16 %v157
  %v419 = vunpack.c.l.b16 %v158
  %v420 = vunpack.c.l.b16 %v159
  %v421 = vunpack.c.l.b16 %v160
  %v422 = vunpack.c.l.b16 %v161
  %v423 = vunpack.c.l.b16 %v162
  %v424 = vunpack.c.l.b16 %v163
  %v425 = vunpack.c.l.b16 %v164
  %v426 = vunpack.c.l.b16 %v165
  %v427 = vunpack.c.l.b16 %v166
  %v428 = vunpack.c.l.b16 %v167
  %v429 = vunpack.c.l.b16 %v168
  %v430 = vunpack.c.l.b16 %v169
  %v431 = vunpack.c.l.b16 %v170
  %v432 = vunpack.c.l.b16 %v171
  %v433 = vunpack.c.l.b16 %v172
  %v434 = vunpack.c.l.b16 %v173
  %v435 = vunpack.c.l.b16 %v174
  %v436 = vunpack.c.l.b16 %v175
  %v437 = vunpack.c.l.b16 %v176
  %v438 = vunpack.c.l.b16 %v177
  %v439 = vunpack.c.l.b16 %v178
  %v440 = vunpack.c.l.b16 %v179
  %v441 = vunpack.c.l.b16 %v180
  %v442 = vunpack.c.l.b16 %v181
  %v443 = vunpack.c.l.b16 %v182
  %v444 = vunpack.c.l.b16 %v183
  %v445 = vunpack.c.l.b16 %v184
  %v446 = vunpack.c.l.b16 %v185
  %v447 = vunpack.c.l.b16 %v186
  %v448 = vunpack.c.l.b16 %v187
  %v449 = vunpack.c.l.b16 %v188
  %v450 = vunpack.c.l.b16 %v189
  %v451 = vunpack.c.l.b16 %v190
  %v452 = vunpack.c.l.b16 %v191
  %v453 = vunpack.c.l.b16 %v192
  %v454 = vunpack.c.l.b16 %v193
  %v455 = vunpack.c.l.b16 %v194
  %v456 = vunpack.c.l.b16 %v195
  %v457 = vunpack.c.l.b16 %v196
  %v458 = vunpack.c.l.b16 %v197
  %v459 = vunpack.c.l.b16 %v198
  %v460 = vunpack.c.l.b16 %v199
  %v461 = vunpack.c.l.b16 %v200
  %v462 = vunpack.c.l.b16 %v201
  %v463 = vunpack.c.l.b16 %v202
  %v464 = vunpack.c.l.b16 %v203
  %v465 = vunpack.c.l.b16 %v204
  %v466 = vunpack.c.l.b16 %v205
  %v467 = vunpack.c.l.b16 %v206
  %v468 = vunpack.c.l.b16 %v207
  %v469 = vunpack.c.l.b16 %v208
  %v470 = vunpack.c.l.b16 %v209
  %v471 = vunpack.c.l.b16 %v210
  %v472 = vunpack.c.l.b16 %v211
  %v473 = vunpack.c.l.b16 %v212
  %v474 = vunpack.c.l.b16 %v213
  %v475 = vunpack.c.l.b16 %v214
  %v476 = vunpack.c.l.b16 %v215
  %v477 = vunpack.c.l.b16 %v216
  %v478 = vunpack.c.l.b16 %v217
  %v479 = vunpack.c.l.b16 %v218
  %v480 = vunpack.c.l.b16 %v219
  %v481 = vunpack.c.l.b16 %v220
  %v482 = vunpack.c.l.b16 %v221
  %v483 = vunpack.c.l.b16 %v222
  %v484 = vunpack.c.l.b16 %v223
  %v485 = vunpack.c.l.b16 %v224
  %v486 = vunpack.c.l.b16 %v225
  %v487 = vunpack.c.l.b16 %v226
  %v488 = vunpack.c.l.b16 %v227
  %v489 = vunpack.c.l.b16 %v228
  %v490 = vunpack.c.l.b16 %v229
  %v491 = vunpack.c.l.b16 %v230
  %v492 = vunpack.c.l.b16 %v231
  %v493 = vunpack.c.l.b16 %v232
  %v494 = vunpack.c.l.b16 %v233
  %v495 = vunpack.c.l.b16 %v234
  %v496 = vunpack.c.l.b16 %v235
  %v497 = vunpack.c.l.b16 %v236
  %v498 = vunpack.c.l.b16 %v237
  %v499 = vunpack.c.l.b16 %v238
  %v500 = vunpack.c.l.b16 %v239
  %v501 = vunpack.c.l.b16 %v240
  %v502 = vunpack.c.l.b16 %v241
  %v503 = vunpack.c.l.b16 %v242
  %v504 = vunpack.c.l.b16 %v243
  %v505 = vunpack.c.l.b16 %v244
  %v506 = vunpack.c.l.b16 %v245
  %v507 = vunpack.c.l.b16 %v246
  %v508 = vunpack.c.l.b16 %v247
  %v509 = vunpack.c.l.b16 %v248
  %v510 = vunpack.c.l.b16 %v249
  %v511 = vunpack.c.l.b16 %v250
  %v512 = vunpack.c.l.b16 %v251
  %v513 = vunpack.c.l.b16 %v252
  %v514 = vunpack.c.l.b16 %v253
  %v515 = vunpack.c.l.b16 %v254
  %v516 = vunpack.c.l.b16 %v255
  %v517 = vunpack.c.l.b16 %v256
  %v518 = vunpack.c.l.b16 %v257
  %v519 = vunpack.c.l.b16 %v258
  %v520 = vunpack.c.l.b16 %v259
  %v521 = vunpack.c.l.b16 %v260
  %v522 = vunpack.c.l.b16 %v261
  %v523 = vunpack.c.l.b16 %v262
  %v524 = vunpack.c.l.b16 %v263
  %v525 = vunpack.c.l.b16 %v264
  %v526 = vunpack.c.l.b16 %v265
  %v527 = vunpack.c.l.b16 %v266
  %v528 = vunpack.c.l.b16 %v267
  %v529 = vunpack.c.l.b16 %v268
  %v530 = vunpack.c.l.b16 %v269
  %v531 = vunpack.c.l.b16 %v270
  %v532 = vunpack.c.l.b16 %v271
  %v533 = vunpack.c.l.b16 %v272
  %v534 = vunpack.c.l.b16 %v273
  %v535 = vunpack.c.l.b16 %v274
  %v536 = vunpack.c.l.b16 %v275
  %v537 = vunpack.c.l.b16 %v276
  %v538 = vunpack.c.l.b16 %v277
  %v539 = vunpack.c.l.b16 %v278
  %v540 = vunpack.c.l.b16 %v279
  %v541 = vunpack.c.l.b16 %v280
  %v542 = vunpack.c.l.b16 %v281
  %v543 = vunpack.c.l.b16 %v282
  %v544 = vunpack.c.l.b16 %v283
  %v545 = vpack.c.b16 %v418, %v417
  %v546 = vpack.c.b16 %v420, %v419
  %v547 = vpack.c.b16 %v422, %v421
  %v548 = vpack.c.b16 %v424, %v423
  %v549 = vpack.c.b16 %v426, %v425
  %v550 = vpack.c.b16 %v428, %v427
  %v551 = vpack.c.b16 %v430, %v429
  %v552 = vpack.c.b16 %v432, %v431
  %v553 = vpack.c.b16 %v434, %v433
  %v554 = vpack.c.b16 %v436, %v435
  %v555 = vpack.c.b16 %v438, %v437
  %v556 = vpack.c.b16 %v440, %v439
  %v557 = vpack.c.b16 %v442, %v441
  %v558 = vpack.c.b16 %v444, %v443
  %v559 = vpack.c.b16 %v446, %v445
  %v560 = vpack.c.b16 %v448, %v447
  %v561 = vpack.c.b16 %v450, %v449
  %v562 = vpack.c.b16 %v452, %v451
  %v563 = vpack.c.b16 %v454, %v453
  %v564 = vpack.c.b16 %v456, %v455
  %v565 = vpack.c.b16 %v458, %v457
  %v566 = vpack.c.b16 %v460, %v459
  %v567 = vpack.c.b16 %v462, %v461
  %v568 = vpack.c.b16 %v464, %v463
  %v569 = vpack.c.b16 %v466, %v465
  %v570 = vpack.c.b16 %v468, %v467
  %v571 = vpack.c.b16 %v470, %v469
  %v572 = vpack.c.b16 %v472, %v471
  %v573 = vpack.c.b16 %v474, %v473
  %v574 = vpack.c.b16 %v476, %v475
  %v575 = vpack.c.b16 %v478, %v477
  %v576 = vpack.c.b16 %v480, %v479
  %v577 = vpack.c.b16 %v482, %v481
  %v578 = vpack.c.b16 %v484, %v483
  %v579 = vpack.c.b16 %v486, %v485
  %v580 = vpack.c.b16 %v488, %v487
  %v581 = vpack.c.b16 %v490, %v489
  %v582 = vpack.c.b16 %v492, %v491
  %v583 = vpack.c.b16 %v494, %v493
  %v584 = vpack.c.b16 %v496, %v495
  %v585 = vpack.c.b16 %v498, %v497
  %v586 = vpack.c.b16 %v500, %v499
  %v587 = vpack.c.b16 %v502, %v501
  %v588 = vpack.c.b16 %v504, %v503
  %v589 = vpack.c.b16 %v506, %v505
  %v590 = vpack.c.b16 %v508, %v507
  %v591 = vpack.c.b16 %v510, %v509
  %v592 = vpack.c.b16 %v512, %v511
  %v593 = vpack.c.b16 %v514, %v513
  %v594 = vpack.c.b16 %v516, %v515
  %v595 = vpack.c.b16 %v518, %v517
  %v596 = vpack.c.b16 %v520, %v519
  %v597 = vpack.c.b16 %v522, %v521
  %v598 = vpack.c.b16 %v524, %v523
  %v599 = vpack.c.b16 %v526, %v525
  %v600 = vpack.c.b16 %v528, %v527
  %v601 = vpack.c.b16 %v530, %v529
  %v602 = vpack.c.b16 %v532, %v531
  %v603 = vpack.c.b16 %v534, %v533
  %v604 = vpack.c.b16 %v536, %v535
  %v605 = vpack.c.b16 %v538, %v537
  %v606 = vpack.c.b16 %v540, %v539
  %v607 = vpack.c.b16 %v542, %v541
  %v608 = vpack.c.b16 %v544, %v543
  %v613 = vunpack.c.l.b16 %v285
  %v614 = vunpack.c.l.b16 %v286
  %v615 = vunpack.c.l.b16 %v287
  %v616 = vunpack.c.l.b16 %v288
  %v617 = vpack.c.b16 %v614, %v613
  %v618 = vpack.c.b16 %v616, %v615
  %vm621 = vcmask 261120
  %v623 = vsel %vm621, %v545, 0
  %v626 = vsel %vm621, %v546, 0
  %v629 = vsel %vm621, %v547, 0
  %v632 = vsel %vm621, %v548, 0
  %v635 = vsel %vm621, %v549, 0
  %v638 = vsel %vm621, %v550, 0
  %v641 = vsel %vm621, %v551, 0
  %v644 = vsel %vm621, %v552, 0
  %v647 = vsel %vm621, %v553, 0
  %v650 = vsel %vm621, %v554, 0
  %v653 = vsel %vm621, %v555, 0
  %v656 = vsel %vm621, %v556, 0
  %v659 = vsel %vm621, %v557, 0
  %v662 = vsel %vm621, %v558, 0
  %v665 = vsel %vm621, %v559, 0
  %v668 = vsel %vm621, %v560, 0
  %v671 = vsel %vm621, %v561, 0
  %v674 = vsel %vm621, %v562, 0
  %v677 = vsel %vm621, %v563, 0
  %v680 = vsel %vm621, %v564, 0
  %v683 = vsel %vm621, %v565, 0
  %v686 = vsel %vm621, %v566, 0
  %v689 = vsel %vm621, %v567, 0
  %v692 = vsel %vm621, %v568, 0
  %v695 = vsel %vm621, %v569, 0
  %v698 = vsel %vm621, %v570, 0
  %v701 = vsel %vm621, %v571, 0
  %v704 = vsel %vm621, %v572, 0
  %v707 = vsel %vm621, %v573, 0
  %v710 = vsel %vm621, %v574, 0
  %v713 = vsel %vm621, %v575, 0
  %v716 = vsel %vm621, %v576, 0
  %v719 = vsel %vm621, %v577, 0
  %v722 = vsel %vm621, %v578, 0
  %v725 = vsel %vm621, %v579, 0
  %v728 = vsel %vm621, %v580, 0
  %v731 = vsel %vm621, %v581, 0
  %v734 = vsel %vm621, %v582, 0
  %v737 = vsel %vm621, %v583, 0
  %v740 = vsel %vm621, %v584, 0
  %v743 = vsel %vm621, %v585, 0
  %v746 = vsel %vm621, %v586, 0
  %v749 = vsel %vm621, %v587, 0
  %v752 = vsel %vm621, %v588, 0
  %v755 = vsel %vm621, %v589, 0
  %v758 = vsel %vm621, %v590, 0
  %v761 = vsel %vm621, %v591, 0
  %v764 = vsel %vm621, %v592, 0
  %v767 = vsel %vm621, %v593, 0
  %v770 = vsel %vm621, %v594, 0
  %v773 = vsel %vm621, %v595, 0
  %v776 = vsel %vm621, %v596, 0
  %v779 = vsel %vm621, %v597, 0
  %v782 = vsel %vm621, %v598, 0
  %v785 = vsel %vm621, %v599, 0
  %v788 = vsel %vm621, %v600, 0
  %v791 = vsel %vm621, %v601, 0
  %v794 = vsel %vm621, %v602, 0
  %v797 = vsel %vm621, %v603, 0
  %v800 = vsel %vm621, %v604, 0
  %v803 = vsel %vm621, %v605, 0
  %v806 = vsel %vm621, %v606, 0
  %v809 = vsel %vm621, %v607, 0
  %v812 = vsel %vm621, %v608, 0
  %814 = vmatprep.subr.bf16.mxu0 0
  %815 = vmatpush1.bf16.msra.mxu0 0
  %816 = vmatprep.subr.bf16.mxu0 0
  %817 = vmatpush1.bf16.msra.mxu0 0
  %818 = vmatprep.subr.bf16.mxu0 0
  %819 = vmatpush1.bf16.msra.mxu0 0
  %820 = vmatprep.subr.bf16.mxu0 0
  %821 = vmatpush1.bf16.msra.mxu0 0
  %822 = vmatprep.subr.bf16.mxu0 0
  %823 = vmatpush1.bf16.msra.mxu0 0
  %824 = vmatprep.subr.bf16.mxu0 0
  %825 = vmatpush1.bf16.msra.mxu0 0
  %826 = vmatprep.subr.bf16.mxu0 0
  %827 = vmatpush1.bf16.msra.mxu0 %v618
  %828 = vmatprep.subr.bf16.mxu0 0
  %829 = vmatpush1.bf16.msra.mxu0 %v617
  %830 = vmatprep.subr.bf16.mxu0 0
  %831 = vmatpush2.bf16.msra.mxu0 0
  %832 = vmatprep.subr.bf16.mxu0 0
  %833 = vmatpush2.bf16.msra.mxu0 0
  %834 = vmatprep.subr.bf16.mxu0 0
  %835 = vmatpush2.bf16.msra.mxu0 0
  %836 = vmatprep.subr.bf16.mxu0 0
  %837 = vmatpush2.bf16.msra.mxu0 0
  %838 = vmatprep.subr.bf16.mxu0 0
  %839 = vmatpush2.bf16.msra.mxu0 0
  %840 = vmatprep.subr.bf16.mxu0 0
  %841 = vmatpush2.bf16.msra.mxu0 0
  %842 = vmatprep.subr.bf16.mxu0 0
  %843 = vmatpush2.bf16.msra.mxu0 0
  %844 = vmatprep.subr.bf16.mxu0 0
  %845 = vmatpush2.bf16.msra.mxu0 0
  %846 = vmatprep.mubr.bf16.mxu0 0
  %847 = vmatmul.mubr.bf16.gmra.mxu0 %v623
  %v848 = vpop.f32.mrf.mxu0
  %v849 = vadd.f32 0.0, %v848
  %v850 = vpop.f32.mrf.mxu0
  %v851 = vpop.f32.mrf.mxu0
  %v852 = vadd.f32 0.0, %v851
  %v853 = vpop.f32.mrf.mxu0
  %854 = vmatprep.mubr.bf16.mxu0 0
  %855 = vmatmul.mubr.bf16.gmra.mxu0 %v626
  %v856 = vpop.f32.mrf.mxu0
  %v857 = vadd.f32 0.0, %v856
  %v858 = vpop.f32.mrf.mxu0
  %v859 = vpop.f32.mrf.mxu0
  %v860 = vadd.f32 0.0, %v859
  %v861 = vpop.f32.mrf.mxu0
  %862 = vmatprep.mubr.bf16.mxu0 0
  %863 = vmatmul.mubr.bf16.gmra.mxu0 %v629
  %v864 = vpop.f32.mrf.mxu0
  %v865 = vadd.f32 0.0, %v864
  %v866 = vpop.f32.mrf.mxu0
  %v867 = vpop.f32.mrf.mxu0
  %v868 = vadd.f32 0.0, %v867
  %v869 = vpop.f32.mrf.mxu0
  %870 = vmatprep.mubr.bf16.mxu0 0
  %871 = vmatmul.mubr.bf16.gmra.mxu0 %v632
  %v872 = vpop.f32.mrf.mxu0
  %v873 = vadd.f32 0.0, %v872
  %v874 = vpop.f32.mrf.mxu0
  %v875 = vpop.f32.mrf.mxu0
  %v876 = vadd.f32 0.0, %v875
  %v877 = vpop.f32.mrf.mxu0
  %878 = vmatprep.mubr.bf16.mxu0 0
  %879 = vmatmul.mubr.bf16.gmra.mxu0 %v635
  %v880 = vpop.f32.mrf.mxu0
  %v881 = vadd.f32 0.0, %v880
  %v882 = vpop.f32.mrf.mxu0
  %v883 = vpop.f32.mrf.mxu0
  %v884 = vadd.f32 0.0, %v883
  %v885 = vpop.f32.mrf.mxu0
  %886 = vmatprep.mubr.bf16.mxu0 0
  %887 = vmatmul.mubr.bf16.gmra.mxu0 %v638
  %v888 = vpop.f32.mrf.mxu0
  %v889 = vadd.f32 0.0, %v888
  %v890 = vpop.f32.mrf.mxu0
  %v891 = vpop.f32.mrf.mxu0
  %v892 = vadd.f32 0.0, %v891
  %v893 = vpop.f32.mrf.mxu0
  %894 = vmatprep.mubr.bf16.mxu0 0
  %895 = vmatmul.mubr.bf16.gmra.mxu0 %v641
  %v896 = vpop.f32.mrf.mxu0
  %v897 = vadd.f32 0.0, %v896
  %v898 = vpop.f32.mrf.mxu0
  %v899 = vpop.f32.mrf.mxu0
  %v900 = vadd.f32 0.0, %v899
  %v901 = vpop.f32.mrf.mxu0
  %902 = vmatprep.mubr.bf16.mxu0 0
  %903 = vmatmul.mubr.bf16.gmra.mxu0 %v644
  %v904 = vpop.f32.mrf.mxu0
  %v905 = vpop.f32.mrf.mxu0
  %v906 = vpop.f32.mrf.mxu0
  %v907 = vpop.f32.mrf.mxu0
  %908 = vmatprep.mubr.bf16.mxu0 0
  %909 = vmatmul.mubr.bf16.gmra.mxu0 %v647
  %v910 = vpop.f32.mrf.mxu0
  %v911 = vpop.f32.mrf.mxu0
  %v912 = vpop.f32.mrf.mxu0
  %v913 = vpop.f32.mrf.mxu0
  %914 = vmatprep.mubr.bf16.mxu0 0
  %915 = vmatmul.mubr.bf16.gmra.mxu0 %v650
  %v916 = vpop.f32.mrf.mxu0
  %v917 = vadd.f32 0.0, %v916
  %v918 = vpop.f32.mrf.mxu0
  %v919 = vpop.f32.mrf.mxu0
  %v920 = vadd.f32 0.0, %v919
  %v921 = vpop.f32.mrf.mxu0
  %922 = vmatprep.mubr.bf16.mxu0 0
  %923 = vmatmul.mubr.bf16.gmra.mxu0 %v653
  %v924 = vpop.f32.mrf.mxu0
  %v925 = vadd.f32 0.0, %v924
  %v926 = vpop.f32.mrf.mxu0
  %v927 = vpop.f32.mrf.mxu0
  %v928 = vadd.f32 0.0, %v927
  %v929 = vpop.f32.mrf.mxu0
  %930 = vmatprep.mubr.bf16.mxu0 0
  %931 = vmatmul.mubr.bf16.gmra.mxu0 %v656
  %v932 = vpop.f32.mrf.mxu0
  %v933 = vadd.f32 0.0, %v932
  %v934 = vpop.f32.mrf.mxu0
  %v935 = vpop.f32.mrf.mxu0
  %v936 = vadd.f32 0.0, %v935
  %v937 = vpop.f32.mrf.mxu0
  %938 = vmatprep.mubr.bf16.mxu0 0
  %939 = vmatmul.mubr.bf16.gmra.mxu0 %v659
  %v940 = vpop.f32.mrf.mxu0
  %v941 = vadd.f32 0.0, %v940
  %v942 = vpop.f32.mrf.mxu0
  %v943 = vpop.f32.mrf.mxu0
  %v944 = vadd.f32 0.0, %v943
  %v945 = vpop.f32.mrf.mxu0
  %946 = vmatprep.mubr.bf16.mxu0 0
  %947 = vmatmul.mubr.bf16.gmra.mxu0 %v662
  %v948 = vpop.f32.mrf.mxu0
  %v949 = vadd.f32 0.0, %v948
  %v950 = vpop.f32.mrf.mxu0
  %v951 = vpop.f32.mrf.mxu0
  %v952 = vadd.f32 0.0, %v951
  %v953 = vpop.f32.mrf.mxu0
  %954 = vmatprep.mubr.bf16.mxu0 0
  %955 = vmatmul.mubr.bf16.gmra.mxu0 %v665
  %v956 = vpop.f32.mrf.mxu0
  %v957 = vadd.f32 0.0, %v956
  %v958 = vpop.f32.mrf.mxu0
  %v959 = vpop.f32.mrf.mxu0
  %v960 = vadd.f32 0.0, %v959
  %v961 = vpop.f32.mrf.mxu0
  %962 = vmatprep.mubr.bf16.mxu0 0
  %963 = vmatmul.mubr.bf16.gmra.mxu0 %v668
  %v964 = vpop.f32.mrf.mxu0
  %v965 = vadd.f32 0.0, %v964
  %v966 = vpop.f32.mrf.mxu0
  %v967 = vpop.f32.mrf.mxu0
  %v968 = vadd.f32 0.0, %v967
  %v969 = vpop.f32.mrf.mxu0
  %970 = vmatprep.mubr.bf16.mxu0 0
  %971 = vmatmul.mubr.bf16.gmra.mxu0 %v671
  %v972 = vpop.f32.mrf.mxu0
  %v973 = vpop.f32.mrf.mxu0
  %v974 = vpop.f32.mrf.mxu0
  %v975 = vpop.f32.mrf.mxu0
  %976 = vmatprep.mubr.bf16.mxu0 0
  %977 = vmatmul.mubr.bf16.gmra.mxu0 %v674
  %v978 = vpop.f32.mrf.mxu0
  %v979 = vpop.f32.mrf.mxu0
  %v980 = vpop.f32.mrf.mxu0
  %v981 = vpop.f32.mrf.mxu0
  %982 = vmatprep.mubr.bf16.mxu0 0
  %983 = vmatmul.mubr.bf16.gmra.mxu0 %v677
  %v984 = vpop.f32.mrf.mxu0
  %v985 = vadd.f32 0.0, %v984
  %v986 = vpop.f32.mrf.mxu0
  %v987 = vpop.f32.mrf.mxu0
  %v988 = vadd.f32 0.0, %v987
  %v989 = vpop.f32.mrf.mxu0
  %990 = vmatprep.mubr.bf16.mxu0 0
  %991 = vmatmul.mubr.bf16.gmra.mxu0 %v680
  %v992 = vpop.f32.mrf.mxu0
  %v993 = vadd.f32 0.0, %v992
  %v994 = vpop.f32.mrf.mxu0
  %v995 = vpop.f32.mrf.mxu0
  %v996 = vadd.f32 0.0, %v995
  %v997 = vpop.f32.mrf.mxu0
  %998 = vmatprep.mubr.bf16.mxu0 0
  %999 = vmatmul.mubr.bf16.gmra.mxu0 %v683
  %v1000 = vpop.f32.mrf.mxu0
  %v1001 = vadd.f32 0.0, %v1000
  %v1002 = vpop.f32.mrf.mxu0
  %v1003 = vpop.f32.mrf.mxu0
  %v1004 = vadd.f32 0.0, %v1003
  %v1005 = vpop.f32.mrf.mxu0
  %1006 = vmatprep.mubr.bf16.mxu0 0
  %1007 = vmatmul.mubr.bf16.gmra.mxu0 %v686
  %v1008 = vpop.f32.mrf.mxu0
  %v1009 = vadd.f32 0.0, %v1008
  %v1010 = vpop.f32.mrf.mxu0
  %v1011 = vpop.f32.mrf.mxu0
  %v1012 = vadd.f32 0.0, %v1011
  %v1013 = vpop.f32.mrf.mxu0
  %1014 = vmatprep.mubr.bf16.mxu0 0
  %1015 = vmatmul.mubr.bf16.gmra.mxu0 %v689
  %v1016 = vpop.f32.mrf.mxu0
  %v1017 = vadd.f32 0.0, %v1016
  %v1018 = vpop.f32.mrf.mxu0
  %v1019 = vpop.f32.mrf.mxu0
  %v1020 = vadd.f32 0.0, %v1019
  %v1021 = vpop.f32.mrf.mxu0
  %1022 = vmatprep.mubr.bf16.mxu0 0
  %1023 = vmatmul.mubr.bf16.gmra.mxu0 %v692
  %v1024 = vpop.f32.mrf.mxu0
  %v1025 = vadd.f32 0.0, %v1024
  %v1026 = vpop.f32.mrf.mxu0
  %v1027 = vpop.f32.mrf.mxu0
  %v1028 = vadd.f32 0.0, %v1027
  %v1029 = vpop.f32.mrf.mxu0
  %1030 = vmatprep.mubr.bf16.mxu0 0
  %1031 = vmatmul.mubr.bf16.gmra.mxu0 %v695
  %v1032 = vpop.f32.mrf.mxu0
  %v1033 = vadd.f32 0.0, %v1032
  %v1034 = vpop.f32.mrf.mxu0
  %v1035 = vpop.f32.mrf.mxu0
  %v1036 = vadd.f32 0.0, %v1035
  %v1037 = vpop.f32.mrf.mxu0
  %1038 = vmatprep.mubr.bf16.mxu0 0
  %1039 = vmatmul.mubr.bf16.gmra.mxu0 %v698
  %v1040 = vpop.f32.mrf.mxu0
  %v1041 = vpop.f32.mrf.mxu0
  %v1042 = vpop.f32.mrf.mxu0
  %v1043 = vpop.f32.mrf.mxu0
  %1044 = vmatprep.mubr.bf16.mxu0 0
  %1045 = vmatmul.mubr.bf16.gmra.mxu0 %v701
  %v1046 = vpop.f32.mrf.mxu0
  %v1047 = vpop.f32.mrf.mxu0
  %v1048 = vpop.f32.mrf.mxu0
  %v1049 = vpop.f32.mrf.mxu0
  %1050 = vmatprep.mubr.bf16.mxu0 0
  %1051 = vmatmul.mubr.bf16.gmra.mxu0 %v704
  %v1052 = vpop.f32.mrf.mxu0
  %v1053 = vadd.f32 0.0, %v1052
  %v1054 = vpop.f32.mrf.mxu0
  %v1055 = vpop.f32.mrf.mxu0
  %v1056 = vadd.f32 0.0, %v1055
  %v1057 = vpop.f32.mrf.mxu0
  %1058 = vmatprep.mubr.bf16.mxu0 0
  %1059 = vmatmul.mubr.bf16.gmra.mxu0 %v707
  %v1060 = vpop.f32.mrf.mxu0
  %v1061 = vadd.f32 0.0, %v1060
  %v1062 = vpop.f32.mrf.mxu0
  %v1063 = vpop.f32.mrf.mxu0
  %v1064 = vadd.f32 0.0, %v1063
  %v1065 = vpop.f32.mrf.mxu0
  %1066 = vmatprep.mubr.bf16.mxu0 0
  %1067 = vmatmul.mubr.bf16.gmra.mxu0 %v710
  %v1068 = vpop.f32.mrf.mxu0
  %v1069 = vadd.f32 0.0, %v1068
  %v1070 = vpop.f32.mrf.mxu0
  %v1071 = vpop.f32.mrf.mxu0
  %v1072 = vadd.f32 0.0, %v1071
  %v1073 = vpop.f32.mrf.mxu0
  %1074 = vmatprep.mubr.bf16.mxu0 0
  %1075 = vmatmul.mubr.bf16.gmra.mxu0 %v713
  %v1076 = vpop.f32.mrf.mxu0
  %v1077 = vadd.f32 0.0, %v1076
  %v1078 = vpop.f32.mrf.mxu0
  %v1079 = vpop.f32.mrf.mxu0
  %v1080 = vadd.f32 0.0, %v1079
  %v1081 = vpop.f32.mrf.mxu0
  %1082 = vmatprep.mubr.bf16.mxu0 0
  %1083 = vmatmul.mubr.bf16.gmra.mxu0 %v716
  %v1084 = vpop.f32.mrf.mxu0
  %v1085 = vadd.f32 0.0, %v1084
  %v1086 = vpop.f32.mrf.mxu0
  %v1087 = vpop.f32.mrf.mxu0
  %v1088 = vadd.f32 0.0, %v1087
  %v1089 = vpop.f32.mrf.mxu0
  %1090 = vmatprep.mubr.bf16.mxu0 0
  %1091 = vmatmul.mubr.bf16.gmra.mxu0 %v719
  %v1092 = vpop.f32.mrf.mxu0
  %v1093 = vadd.f32 0.0, %v1092
  %v1094 = vpop.f32.mrf.mxu0
  %v1095 = vpop.f32.mrf.mxu0
  %v1096 = vadd.f32 0.0, %v1095
  %v1097 = vpop.f32.mrf.mxu0
  %1098 = vmatprep.mubr.bf16.mxu0 0
  %1099 = vmatmul.mubr.bf16.gmra.mxu0 %v722
  %v1100 = vpop.f32.mrf.mxu0
  %v1101 = vadd.f32 0.0, %v1100
  %v1102 = vpop.f32.mrf.mxu0
  %v1103 = vpop.f32.mrf.mxu0
  %v1104 = vadd.f32 0.0, %v1103
  %v1105 = vpop.f32.mrf.mxu0
  %1106 = vmatprep.mubr.bf16.mxu0 0
  %1107 = vmatmul.mubr.bf16.gmra.mxu0 %v725
  %v1108 = vpop.f32.mrf.mxu0
  %v1109 = vpop.f32.mrf.mxu0
  %v1110 = vpop.f32.mrf.mxu0
  %v1111 = vpop.f32.mrf.mxu0
  %1112 = vmatprep.mubr.bf16.mxu0 0
  %1113 = vmatmul.mubr.bf16.gmra.mxu0 %v728
  %v1114 = vpop.f32.mrf.mxu0
  %v1115 = vpop.f32.mrf.mxu0
  %v1116 = vpop.f32.mrf.mxu0
  %v1117 = vpop.f32.mrf.mxu0
  %1118 = vmatprep.mubr.bf16.mxu0 0
  %1119 = vmatmul.mubr.bf16.gmra.mxu0 %v731
  %v1120 = vpop.f32.mrf.mxu0
  %v1121 = vadd.f32 0.0, %v1120
  %v1122 = vpop.f32.mrf.mxu0
  %v1123 = vpop.f32.mrf.mxu0
  %v1124 = vadd.f32 0.0, %v1123
  %v1125 = vpop.f32.mrf.mxu0
  %1126 = vmatprep.mubr.bf16.mxu0 0
  %1127 = vmatmul.mubr.bf16.gmra.mxu0 %v734
  %v1128 = vpop.f32.mrf.mxu0
  %v1129 = vadd.f32 0.0, %v1128
  %v1130 = vpop.f32.mrf.mxu0
  %v1131 = vpop.f32.mrf.mxu0
  %v1132 = vadd.f32 0.0, %v1131
  %v1133 = vpop.f32.mrf.mxu0
  %1134 = vmatprep.mubr.bf16.mxu0 0
  %1135 = vmatmul.mubr.bf16.gmra.mxu0 %v737
  %v1136 = vpop.f32.mrf.mxu0
  %v1137 = vadd.f32 0.0, %v1136
  %v1138 = vpop.f32.mrf.mxu0
  %v1139 = vpop.f32.mrf.mxu0
  %v1140 = vadd.f32 0.0, %v1139
  %v1141 = vpop.f32.mrf.mxu0
  %1142 = vmatprep.mubr.bf16.mxu0 0
  %1143 = vmatmul.mubr.bf16.gmra.mxu0 %v740
  %v1144 = vpop.f32.mrf.mxu0
  %v1145 = vadd.f32 0.0, %v1144
  %v1146 = vpop.f32.mrf.mxu0
  %v1147 = vpop.f32.mrf.mxu0
  %v1148 = vadd.f32 0.0, %v1147
  %v1149 = vpop.f32.mrf.mxu0
  %1150 = vmatprep.mubr.bf16.mxu0 0
  %1151 = vmatmul.mubr.bf16.gmra.mxu0 %v743
  %v1152 = vpop.f32.mrf.mxu0
  %v1153 = vadd.f32 0.0, %v1152
  %v1154 = vpop.f32.mrf.mxu0
  %v1155 = vpop.f32.mrf.mxu0
  %v1156 = vadd.f32 0.0, %v1155
  %v1157 = vpop.f32.mrf.mxu0
  %1158 = vmatprep.mubr.bf16.mxu0 0
  %1159 = vmatmul.mubr.bf16.gmra.mxu0 %v746
  %v1160 = vpop.f32.mrf.mxu0
  %v1161 = vadd.f32 0.0, %v1160
  %v1162 = vpop.f32.mrf.mxu0
  %v1163 = vpop.f32.mrf.mxu0
  %v1164 = vadd.f32 0.0, %v1163
  %v1165 = vpop.f32.mrf.mxu0
  %1166 = vmatprep.mubr.bf16.mxu0 0
  %1167 = vmatmul.mubr.bf16.gmra.mxu0 %v749
  %v1168 = vpop.f32.mrf.mxu0
  %v1169 = vadd.f32 0.0, %v1168
  %v1170 = vpop.f32.mrf.mxu0
  %v1171 = vpop.f32.mrf.mxu0
  %v1172 = vadd.f32 0.0, %v1171
  %v1173 = vpop.f32.mrf.mxu0
  %1174 = vmatprep.mubr.bf16.mxu0 0
  %1175 = vmatmul.mubr.bf16.gmra.mxu0 %v752
  %v1176 = vpop.f32.mrf.mxu0
  %v1177 = vpop.f32.mrf.mxu0
  %v1178 = vpop.f32.mrf.mxu0
  %v1179 = vpop.f32.mrf.mxu0
  %1180 = vmatprep.mubr.bf16.mxu0 0
  %1181 = vmatmul.mubr.bf16.gmra.mxu0 %v755
  %v1182 = vpop.f32.mrf.mxu0
  %v1183 = vpop.f32.mrf.mxu0
  %v1184 = vpop.f32.mrf.mxu0
  %v1185 = vpop.f32.mrf.mxu0
  %1186 = vmatprep.mubr.bf16.mxu0 0
  %1187 = vmatmul.mubr.bf16.gmra.mxu0 %v758
  %v1188 = vpop.f32.mrf.mxu0
  %v1189 = vadd.f32 0.0, %v1188
  %v1190 = vpop.f32.mrf.mxu0
  %v1191 = vpop.f32.mrf.mxu0
  %v1192 = vadd.f32 0.0, %v1191
  %v1193 = vpop.f32.mrf.mxu0
  %1194 = vmatprep.mubr.bf16.mxu0 0
  %1195 = vmatmul.mubr.bf16.gmra.mxu0 %v761
  %v1196 = vpop.f32.mrf.mxu0
  %v1197 = vadd.f32 0.0, %v1196
  %v1198 = vpop.f32.mrf.mxu0
  %v1199 = vpop.f32.mrf.mxu0
  %v1200 = vadd.f32 0.0, %v1199
  %v1201 = vpop.f32.mrf.mxu0
  %1202 = vmatprep.mubr.bf16.mxu0 0
  %1203 = vmatmul.mubr.bf16.gmra.mxu0 %v764
  %v1204 = vpop.f32.mrf.mxu0
  %v1205 = vadd.f32 0.0, %v1204
  %v1206 = vpop.f32.mrf.mxu0
  %v1207 = vpop.f32.mrf.mxu0
  %v1208 = vadd.f32 0.0, %v1207
  %v1209 = vpop.f32.mrf.mxu0
  %1210 = vmatprep.mubr.bf16.mxu0 0
  %1211 = vmatmul.mubr.bf16.gmra.mxu0 %v767
  %v1212 = vpop.f32.mrf.mxu0
  %v1213 = vadd.f32 0.0, %v1212
  %v1214 = vpop.f32.mrf.mxu0
  %v1215 = vpop.f32.mrf.mxu0
  %v1216 = vadd.f32 0.0, %v1215
  %v1217 = vpop.f32.mrf.mxu0
  %1218 = vmatprep.mubr.bf16.mxu0 0
  %1219 = vmatmul.mubr.bf16.gmra.mxu0 %v770
  %v1220 = vpop.f32.mrf.mxu0
  %v1221 = vadd.f32 0.0, %v1220
  %v1222 = vpop.f32.mrf.mxu0
  %v1223 = vpop.f32.mrf.mxu0
  %v1224 = vadd.f32 0.0, %v1223
  %v1225 = vpop.f32.mrf.mxu0
  %1226 = vmatprep.mubr.bf16.mxu0 0
  %1227 = vmatmul.mubr.bf16.gmra.mxu0 %v773
  %v1228 = vpop.f32.mrf.mxu0
  %v1229 = vadd.f32 0.0, %v1228
  %v1230 = vpop.f32.mrf.mxu0
  %v1231 = vpop.f32.mrf.mxu0
  %v1232 = vadd.f32 0.0, %v1231
  %v1233 = vpop.f32.mrf.mxu0
  %1234 = vmatprep.mubr.bf16.mxu0 0
  %1235 = vmatmul.mubr.bf16.gmra.mxu0 %v776
  %v1236 = vpop.f32.mrf.mxu0
  %v1237 = vadd.f32 0.0, %v1236
  %v1238 = vpop.f32.mrf.mxu0
  %v1239 = vpop.f32.mrf.mxu0
  %v1240 = vadd.f32 0.0, %v1239
  %v1241 = vpop.f32.mrf.mxu0
  %1242 = vmatprep.mubr.bf16.mxu0 0
  %1243 = vmatmul.mubr.bf16.gmra.mxu0 %v779
  %v1244 = vpop.f32.mrf.mxu0
  %v1245 = vpop.f32.mrf.mxu0
  %v1246 = vpop.f32.mrf.mxu0
  %v1247 = vpop.f32.mrf.mxu0
  %1248 = vmatprep.mubr.bf16.mxu0 0
  %1249 = vmatmul.mubr.bf16.gmra.mxu0 %v782
  %v1250 = vpop.f32.mrf.mxu0
  %v1251 = vpop.f32.mrf.mxu0
  %v1252 = vpop.f32.mrf.mxu0
  %v1253 = vpop.f32.mrf.mxu0
  %1254 = vmatprep.mubr.bf16.mxu0 0
  %1255 = vmatmul.mubr.bf16.gmra.mxu0 %v785
  %v1256 = vpop.f32.mrf.mxu0
  %v1257 = vadd.f32 0.0, %v1256
  %v1258 = vpop.f32.mrf.mxu0
  %v1259 = vpop.f32.mrf.mxu0
  %v1260 = vadd.f32 0.0, %v1259
  %v1261 = vpop.f32.mrf.mxu0
  %1262 = vmatprep.mubr.bf16.mxu0 0
  %1263 = vmatmul.mubr.bf16.gmra.mxu0 %v788
  %v1264 = vpop.f32.mrf.mxu0
  %v1265 = vadd.f32 0.0, %v1264
  %v1266 = vpop.f32.mrf.mxu0
  %v1267 = vpop.f32.mrf.mxu0
  %v1268 = vadd.f32 0.0, %v1267
  %v1269 = vpop.f32.mrf.mxu0
  %1270 = vmatprep.mubr.bf16.mxu0 0
  %1271 = vmatmul.mubr.bf16.gmra.mxu0 %v791
  %v1272 = vpop.f32.mrf.mxu0
  %v1273 = vadd.f32 0.0, %v1272
  %v1274 = vpop.f32.mrf.mxu0
  %v1275 = vpop.f32.mrf.mxu0
  %v1276 = vadd.f32 0.0, %v1275
  %v1277 = vpop.f32.mrf.mxu0
  %1278 = vmatprep.mubr.bf16.mxu0 0
  %1279 = vmatmul.mubr.bf16.gmra.mxu0 %v794
  %v1280 = vpop.f32.mrf.mxu0
  %v1281 = vadd.f32 0.0, %v1280
  %v1282 = vpop.f32.mrf.mxu0
  %v1283 = vpop.f32.mrf.mxu0
  %v1284 = vadd.f32 0.0, %v1283
  %v1285 = vpop.f32.mrf.mxu0
  %1286 = vmatprep.mubr.bf16.mxu0 0
  %1287 = vmatmul.mubr.bf16.gmra.mxu0 %v797
  %v1288 = vpop.f32.mrf.mxu0
  %v1289 = vadd.f32 0.0, %v1288
  %v1290 = vpop.f32.mrf.mxu0
  %v1291 = vpop.f32.mrf.mxu0
  %v1292 = vadd.f32 0.0, %v1291
  %v1293 = vpop.f32.mrf.mxu0
  %1294 = vmatprep.mubr.bf16.mxu0 0
  %1295 = vmatmul.mubr.bf16.gmra.mxu0 %v800
  %v1296 = vpop.f32.mrf.mxu0
  %v1297 = vadd.f32 0.0, %v1296
  %v1298 = vpop.f32.mrf.mxu0
  %v1299 = vpop.f32.mrf.mxu0
  %v1300 = vadd.f32 0.0, %v1299
  %v1301 = vpop.f32.mrf.mxu0
  %1302 = vmatprep.mubr.bf16.mxu0 0
  %1303 = vmatmul.mubr.bf16.gmra.mxu0 %v803
  %v1304 = vpop.f32.mrf.mxu0
  %v1305 = vadd.f32 0.0, %v1304
  %v1306 = vpop.f32.mrf.mxu0
  %v1307 = vpop.f32.mrf.mxu0
  %v1308 = vadd.f32 0.0, %v1307
  %v1309 = vpop.f32.mrf.mxu0
  %1310 = vmatprep.mubr.bf16.mxu0 0
  %1311 = vmatmul.mubr.bf16.gmra.mxu0 %v806
  %v1312 = vpop.f32.mrf.mxu0
  %v1313 = vpop.f32.mrf.mxu0
  %v1314 = vpop.f32.mrf.mxu0
  %v1315 = vpop.f32.mrf.mxu0
  %1316 = vmatprep.mubr.bf16.mxu0 0
  %1317 = vmatmul.mubr.bf16.gmra.mxu0 %v809
  %v1318 = vpop.f32.mrf.mxu0
  %v1319 = vpop.f32.mrf.mxu0
  %v1320 = vpop.f32.mrf.mxu0
  %v1321 = vpop.f32.mrf.mxu0
  %1322 = vmatprep.mubr.bf16.mxu0 0
  %1323 = vmatmul.mubr.bf16.gmra.mxu0 %v812
  %v1324 = vpop.f32.mrf.mxu0
  %v1325 = vpop.f32.mrf.mxu0
  %v1326 = vpop.f32.mrf.mxu0
  %v1327 = vpop.f32.mrf.mxu0
  %1328 = vdwg.mxu0
  %v1457 = vunpack.c.l.b16 %v23
  %v1458 = vunpack.c.l.b16 %v24
  %v1459 = vunpack.c.l.b16 %v25
  %v1460 = vunpack.c.l.b16 %v26
  %v1461 = vunpack.c.l.b16 %v27
  %v1462 = vunpack.c.l.b16 %v28
  %v1463 = vunpack.c.l.b16 %v29
  %v1464 = vunpack.c.l.b16 %v30
  %v1465 = vunpack.c.l.b16 %v31
  %v1466 = vunpack.c.l.b16 %v32
  %v1467 = vunpack.c.l.b16 %v33
  %v1468 = vunpack.c.l.b16 %v34
  %v1469 = vunpack.c.l.b16 %v35
  %v1470 = vunpack.c.l.b16 %v36
  %v1471 = vunpack.c.l.b16 %v37
  %v1472 = vunpack.c.l.b16 %v38
  %v1473 = vunpack.c.l.b16 %v39
  %v1474 = vunpack.c.l.b16 %v40
  %v1475 = vunpack.c.l.b16 %v41
  %v1476 = vunpack.c.l.b16 %v42
  %v1477 = vunpack.c.l.b16 %v43
  %v1478 = vunpack.c.l.b16 %v44
  %v1479 = vunpack.c.l.b16 %v45
  %v1480 = vunpack.c.l.b16 %v46
  %v1481 = vunpack.c.l.b16 %v47
  %v1482 = vunpack.c.l.b16 %v48
  %v1483 = vunpack.c.l.b16 %v49
  %v1484 = vunpack.c.l.b16 %v50
  %v1485 = vunpack.c.l.b16 %v51
  %v1486 = vunpack.c.l.b16 %v52
  %v1487 = vunpack.c.l.b16 %v53
  %v1488 = vunpack.c.l.b16 %v54
  %v1489 = vunpack.c.l.b16 %v55
  %v1490 = vunpack.c.l.b16 %v56
  %v1491 = vunpack.c.l.b16 %v57
  %v1492 = vunpack.c.l.b16 %v58
  %v1493 = vunpack.c.l.b16 %v59
  %v1494 = vunpack.c.l.b16 %v60
  %v1495 = vunpack.c.l.b16 %v61
  %v1496 = vunpack.c.l.b16 %v62
  %v1497 = vunpack.c.l.b16 %v63
  %v1498 = vunpack.c.l.b16 %v64
  %v1499 = vunpack.c.l.b16 %v65
  %v1500 = vunpack.c.l.b16 %v66
  %v1501 = vunpack.c.l.b16 %v67
  %v1502 = vunpack.c.l.b16 %v68
  %v1503 = vunpack.c.l.b16 %v69
  %v1504 = vunpack.c.l.b16 %v70
  %v1505 = vunpack.c.l.b16 %v71
  %v1506 = vunpack.c.l.b16 %v72
  %v1507 = vunpack.c.l.b16 %v73
  %v1508 = vunpack.c.l.b16 %v74
  %v1509 = vunpack.c.l.b16 %v75
  %v1510 = vunpack.c.l.b16 %v76
  %v1511 = vunpack.c.l.b16 %v77
  %v1512 = vunpack.c.l.b16 %v78
  %v1513 = vunpack.c.l.b16 %v79
  %v1514 = vunpack.c.l.b16 %v80
  %v1515 = vunpack.c.l.b16 %v81
  %v1516 = vunpack.c.l.b16 %v82
  %v1517 = vunpack.c.l.b16 %v83
  %v1518 = vunpack.c.l.b16 %v84
  %v1519 = vunpack.c.l.b16 %v85
  %v1520 = vunpack.c.l.b16 %v86
  %v1521 = vunpack.c.l.b16 %v87
  %v1522 = vunpack.c.l.b16 %v88
  %v1523 = vunpack.c.l.b16 %v89
  %v1524 = vunpack.c.l.b16 %v90
  %v1525 = vunpack.c.l.b16 %v91
  %v1526 = vunpack.c.l.b16 %v92
  %v1527 = vunpack.c.l.b16 %v93
  %v1528 = vunpack.c.l.b16 %v94
  %v1529 = vunpack.c.l.b16 %v95
  %v1530 = vunpack.c.l.b16 %v96
  %v1531 = vunpack.c.l.b16 %v97
  %v1532 = vunpack.c.l.b16 %v98
  %v1533 = vunpack.c.l.b16 %v99
  %v1534 = vunpack.c.l.b16 %v100
  %v1535 = vunpack.c.l.b16 %v101
  %v1536 = vunpack.c.l.b16 %v102
  %v1537 = vunpack.c.l.b16 %v103
  %v1538 = vunpack.c.l.b16 %v104
  %v1539 = vunpack.c.l.b16 %v105
  %v1540 = vunpack.c.l.b16 %v106
  %v1541 = vunpack.c.l.b16 %v107
  %v1542 = vunpack.c.l.b16 %v108
  %v1543 = vunpack.c.l.b16 %v109
  %v1544 = vunpack.c.l.b16 %v110
  %v1545 = vunpack.c.l.b16 %v111
  %v1546 = vunpack.c.l.b16 %v112
  %v1547 = vunpack.c.l.b16 %v113
  %v1548 = vunpack.c.l.b16 %v114
  %v1549 = vunpack.c.l.b16 %v115
  %v1550 = vunpack.c.l.b16 %v116
  %v1551 = vunpack.c.l.b16 %v117
  %v1552 = vunpack.c.l.b16 %v118
  %v1553 = vunpack.c.l.b16 %v119
  %v1554 = vunpack.c.l.b16 %v120
  %v1555 = vunpack.c.l.b16 %v121
  %v1556 = vunpack.c.l.b16 %v122
  %v1557 = vunpack.c.l.b16 %v123
  %v1558 = vunpack.c.l.b16 %v124
  %v1559 = vunpack.c.l.b16 %v125
  %v1560 = vunpack.c.l.b16 %v126
  %v1561 = vunpack.c.l.b16 %v127
  %v1562 = vunpack.c.l.b16 %v128
  %v1563 = vunpack.c.l.b16 %v129
  %v1564 = vunpack.c.l.b16 %v130
  %v1565 = vunpack.c.l.b16 %v131
  %v1566 = vunpack.c.l.b16 %v132
  %v1567 = vunpack.c.l.b16 %v133
  %v1568 = vunpack.c.l.b16 %v134
  %v1569 = vunpack.c.l.b16 %v135
  %v1570 = vunpack.c.l.b16 %v136
  %v1571 = vunpack.c.l.b16 %v137
  %v1572 = vunpack.c.l.b16 %v138
  %v1573 = vunpack.c.l.b16 %v139
  %v1574 = vunpack.c.l.b16 %v140
  %v1575 = vunpack.c.l.b16 %v141
  %v1576 = vunpack.c.l.b16 %v142
  %v1577 = vunpack.c.l.b16 %v143
  %v1578 = vunpack.c.l.b16 %v144
  %v1579 = vunpack.c.l.b16 %v145
  %v1580 = vunpack.c.l.b16 %v146
  %v1581 = vunpack.c.l.b16 %v147
  %v1582 = vunpack.c.l.b16 %v148
  %v1583 = vunpack.c.l.b16 %v149
  %v1584 = vunpack.c.l.b16 %v150
  %v1585 = vpack.c.b16 %v1458, %v1457
  %v1586 = vpack.c.b16 %v1460, %v1459
  %v1587 = vpack.c.b16 %v1462, %v1461
  %v1588 = vpack.c.b16 %v1464, %v1463
  %v1589 = vpack.c.b16 %v1466, %v1465
  %v1590 = vpack.c.b16 %v1468, %v1467
  %v1591 = vpack.c.b16 %v1470, %v1469
  %v1592 = vpack.c.b16 %v1472, %v1471
  %v1593 = vpack.c.b16 %v1474, %v1473
  %v1594 = vpack.c.b16 %v1476, %v1475
  %v1595 = vpack.c.b16 %v1478, %v1477
  %v1596 = vpack.c.b16 %v1480, %v1479
  %v1597 = vpack.c.b16 %v1482, %v1481
  %v1598 = vpack.c.b16 %v1484, %v1483
  %v1599 = vpack.c.b16 %v1486, %v1485
  %v1600 = vpack.c.b16 %v1488, %v1487
  %v1601 = vpack.c.b16 %v1490, %v1489
  %v1602 = vpack.c.b16 %v1492, %v1491
  %v1603 = vpack.c.b16 %v1494, %v1493
  %v1604 = vpack.c.b16 %v1496, %v1495
  %v1605 = vpack.c.b16 %v1498, %v1497
  %v1606 = vpack.c.b16 %v1500, %v1499
  %v1607 = vpack.c.b16 %v1502, %v1501
  %v1608 = vpack.c.b16 %v1504, %v1503
  %v1609 = vpack.c.b16 %v1506, %v1505
  %v1610 = vpack.c.b16 %v1508, %v1507
  %v1611 = vpack.c.b16 %v1510, %v1509
  %v1612 = vpack.c.b16 %v1512, %v1511
  %v1613 = vpack.c.b16 %v1514, %v1513
  %v1614 = vpack.c.b16 %v1516, %v1515
  %v1615 = vpack.c.b16 %v1518, %v1517
  %v1616 = vpack.c.b16 %v1520, %v1519
  %v1617 = vpack.c.b16 %v1522, %v1521
  %v1618 = vpack.c.b16 %v1524, %v1523
  %v1619 = vpack.c.b16 %v1526, %v1525
  %v1620 = vpack.c.b16 %v1528, %v1527
  %v1621 = vpack.c.b16 %v1530, %v1529
  %v1622 = vpack.c.b16 %v1532, %v1531
  %v1623 = vpack.c.b16 %v1534, %v1533
  %v1624 = vpack.c.b16 %v1536, %v1535
  %v1625 = vpack.c.b16 %v1538, %v1537
  %v1626 = vpack.c.b16 %v1540, %v1539
  %v1627 = vpack.c.b16 %v1542, %v1541
  %v1628 = vpack.c.b16 %v1544, %v1543
  %v1629 = vpack.c.b16 %v1546, %v1545
  %v1630 = vpack.c.b16 %v1548, %v1547
  %v1631 = vpack.c.b16 %v1550, %v1549
  %v1632 = vpack.c.b16 %v1552, %v1551
  %v1633 = vpack.c.b16 %v1554, %v1553
  %v1634 = vpack.c.b16 %v1556, %v1555
  %v1635 = vpack.c.b16 %v1558, %v1557
  %v1636 = vpack.c.b16 %v1560, %v1559
  %v1637 = vpack.c.b16 %v1562, %v1561
  %v1638 = vpack.c.b16 %v1564, %v1563
  %v1639 = vpack.c.b16 %v1566, %v1565
  %v1640 = vpack.c.b16 %v1568, %v1567
  %v1641 = vpack.c.b16 %v1570, %v1569
  %v1642 = vpack.c.b16 %v1572, %v1571
  %v1643 = vpack.c.b16 %v1574, %v1573
  %v1644 = vpack.c.b16 %v1576, %v1575
  %v1645 = vpack.c.b16 %v1578, %v1577
  %v1646 = vpack.c.b16 %v1580, %v1579
  %v1647 = vpack.c.b16 %v1582, %v1581
  %v1648 = vpack.c.b16 %v1584, %v1583
  %v1653 = vunpack.c.l.b16 %v151
  %v1654 = vunpack.c.l.b16 %v152
  %v1655 = vunpack.c.l.b16 %v153
  %v1656 = vunpack.c.l.b16 %v154
  %v1657 = vpack.c.b16 %v1654, %v1653
  %v1658 = vpack.c.b16 %v1656, %v1655
  %v1662 = vsel %vm621, %v1585, 0
  %v1665 = vsel %vm621, %v1586, 0
  %v1668 = vsel %vm621, %v1587, 0
  %v1671 = vsel %vm621, %v1588, 0
  %v1674 = vsel %vm621, %v1589, 0
  %v1677 = vsel %vm621, %v1590, 0
  %v1680 = vsel %vm621, %v1591, 0
  %v1683 = vsel %vm621, %v1592, 0
  %v1686 = vsel %vm621, %v1593, 0
  %v1689 = vsel %vm621, %v1594, 0
  %v1692 = vsel %vm621, %v1595, 0
  %v1695 = vsel %vm621, %v1596, 0
  %v1698 = vsel %vm621, %v1597, 0
  %v1701 = vsel %vm621, %v1598, 0
  %v1704 = vsel %vm621, %v1599, 0
  %v1707 = vsel %vm621, %v1600, 0
  %v1710 = vsel %vm621, %v1601, 0
  %v1713 = vsel %vm621, %v1602, 0
  %v1716 = vsel %vm621, %v1603, 0
  %v1719 = vsel %vm621, %v1604, 0
  %v1722 = vsel %vm621, %v1605, 0
  %v1725 = vsel %vm621, %v1606, 0
  %v1728 = vsel %vm621, %v1607, 0
  %v1731 = vsel %vm621, %v1608, 0
  %v1734 = vsel %vm621, %v1609, 0
  %v1737 = vsel %vm621, %v1610, 0
  %v1740 = vsel %vm621, %v1611, 0
  %v1743 = vsel %vm621, %v1612, 0
  %v1746 = vsel %vm621, %v1613, 0
  %v1749 = vsel %vm621, %v1614, 0
  %v1752 = vsel %vm621, %v1615, 0
  %v1755 = vsel %vm621, %v1616, 0
  %v1758 = vsel %vm621, %v1617, 0
  %v1761 = vsel %vm621, %v1618, 0
  %v1764 = vsel %vm621, %v1619, 0
  %v1767 = vsel %vm621, %v1620, 0
  %v1770 = vsel %vm621, %v1621, 0
  %v1773 = vsel %vm621, %v1622, 0
  %v1776 = vsel %vm621, %v1623, 0
  %v1779 = vsel %vm621, %v1624, 0
  %v1782 = vsel %vm621, %v1625, 0
  %v1785 = vsel %vm621, %v1626, 0
  %v1788 = vsel %vm621, %v1627, 0
  %v1791 = vsel %vm621, %v1628, 0
  %v1794 = vsel %vm621, %v1629, 0
  %v1797 = vsel %vm621, %v1630, 0
  %v1800 = vsel %vm621, %v1631, 0
  %v1803 = vsel %vm621, %v1632, 0
  %v1806 = vsel %vm621, %v1633, 0
  %v1809 = vsel %vm621, %v1634, 0
  %v1812 = vsel %vm621, %v1635, 0
  %v1815 = vsel %vm621, %v1636, 0
  %v1818 = vsel %vm621, %v1637, 0
  %v1821 = vsel %vm621, %v1638, 0
  %v1824 = vsel %vm621, %v1639, 0
  %v1827 = vsel %vm621, %v1640, 0
  %v1830 = vsel %vm621, %v1641, 0
  %v1833 = vsel %vm621, %v1642, 0
  %v1836 = vsel %vm621, %v1643, 0
  %v1839 = vsel %vm621, %v1644, 0
  %v1842 = vsel %vm621, %v1645, 0
  %v1845 = vsel %vm621, %v1646, 0
  %v1848 = vsel %vm621, %v1647, 0
  %v1851 = vsel %vm621, %v1648, 0
  %1853 = vmatprep.subr.bf16.mxu0 0
  %1854 = vmatpush1.bf16.msra.mxu0 0
  %1855 = vmatprep.subr.bf16.mxu0 0
  %1856 = vmatpush1.bf16.msra.mxu0 0
  %1857 = vmatprep.subr.bf16.mxu0 0
  %1858 = vmatpush1.bf16.msra.mxu0 0
  %1859 = vmatprep.subr.bf16.mxu0 0
  %1860 = vmatpush1.bf16.msra.mxu0 0
  %1861 = vmatprep.subr.bf16.mxu0 0
  %1862 = vmatpush1.bf16.msra.mxu0 0
  %1863 = vmatprep.subr.bf16.mxu0 0
  %1864 = vmatpush1.bf16.msra.mxu0 0
  %1865 = vmatprep.subr.bf16.mxu0 0
  %1866 = vmatpush1.bf16.msra.mxu0 %v1658
  %1867 = vmatprep.subr.bf16.mxu0 0
  %1868 = vmatpush1.bf16.msra.mxu0 %v1657
  %1869 = vmatprep.subr.bf16.mxu0 0
  %1870 = vmatpush2.bf16.msra.mxu0 0
  %1871 = vmatprep.subr.bf16.mxu0 0
  %1872 = vmatpush2.bf16.msra.mxu0 0
  %1873 = vmatprep.subr.bf16.mxu0 0
  %1874 = vmatpush2.bf16.msra.mxu0 0
  %1875 = vmatprep.subr.bf16.mxu0 0
  %1876 = vmatpush2.bf16.msra.mxu0 0
  %1877 = vmatprep.subr.bf16.mxu0 0
  %1878 = vmatpush2.bf16.msra.mxu0 0
  %1879 = vmatprep.subr.bf16.mxu0 0
  %1880 = vmatpush2.bf16.msra.mxu0 0
  %1881 = vmatprep.subr.bf16.mxu0 0
  %1882 = vmatpush2.bf16.msra.mxu0 0
  %1883 = vmatprep.subr.bf16.mxu0 0
  %1884 = vmatpush2.bf16.msra.mxu0 0
  %1885 = vmatprep.mubr.bf16.mxu0 0
  %1886 = vmatmul.mubr.bf16.gmra.mxu0 %v1662
  %v1887 = vpop.f32.mrf.mxu0
  %v1888 = vadd.f32 %v849, %v1887
  %v1889 = vpop.f32.mrf.mxu0
  %v1890 = vpop.f32.mrf.mxu0
  %v1891 = vadd.f32 %v852, %v1890
  %v1892 = vpop.f32.mrf.mxu0
  %1893 = vmatprep.mubr.bf16.mxu0 0
  %1894 = vmatmul.mubr.bf16.gmra.mxu0 %v1665
  %v1895 = vpop.f32.mrf.mxu0
  %v1896 = vadd.f32 %v857, %v1895
  %v1897 = vpop.f32.mrf.mxu0
  %v1898 = vpop.f32.mrf.mxu0
  %v1899 = vadd.f32 %v860, %v1898
  %v1900 = vpop.f32.mrf.mxu0
  %1901 = vmatprep.mubr.bf16.mxu0 0
  %1902 = vmatmul.mubr.bf16.gmra.mxu0 %v1668
  %v1903 = vpop.f32.mrf.mxu0
  %v1904 = vadd.f32 %v865, %v1903
  %v1905 = vpop.f32.mrf.mxu0
  %v1906 = vpop.f32.mrf.mxu0
  %v1907 = vadd.f32 %v868, %v1906
  %v1908 = vpop.f32.mrf.mxu0
  %1909 = vmatprep.mubr.bf16.mxu0 0
  %1910 = vmatmul.mubr.bf16.gmra.mxu0 %v1671
  %v1911 = vpop.f32.mrf.mxu0
  %v1912 = vadd.f32 %v873, %v1911
  %v1913 = vpop.f32.mrf.mxu0
  %v1914 = vpop.f32.mrf.mxu0
  %v1915 = vadd.f32 %v876, %v1914
  %v1916 = vpop.f32.mrf.mxu0
  %1917 = vmatprep.mubr.bf16.mxu0 0
  %1918 = vmatmul.mubr.bf16.gmra.mxu0 %v1674
  %v1919 = vpop.f32.mrf.mxu0
  %v1920 = vadd.f32 %v881, %v1919
  %v1921 = vpop.f32.mrf.mxu0
  %v1922 = vpop.f32.mrf.mxu0
  %v1923 = vadd.f32 %v884, %v1922
  %v1924 = vpop.f32.mrf.mxu0
  %1925 = vmatprep.mubr.bf16.mxu0 0
  %1926 = vmatmul.mubr.bf16.gmra.mxu0 %v1677
  %v1927 = vpop.f32.mrf.mxu0
  %v1928 = vadd.f32 %v889, %v1927
  %v1929 = vpop.f32.mrf.mxu0
  %v1930 = vpop.f32.mrf.mxu0
  %v1931 = vadd.f32 %v892, %v1930
  %v1932 = vpop.f32.mrf.mxu0
  %1933 = vmatprep.mubr.bf16.mxu0 0
  %1934 = vmatmul.mubr.bf16.gmra.mxu0 %v1680
  %v1935 = vpop.f32.mrf.mxu0
  %v1936 = vadd.f32 %v897, %v1935
  %v1937 = vpop.f32.mrf.mxu0
  %v1938 = vpop.f32.mrf.mxu0
  %v1939 = vadd.f32 %v900, %v1938
  %v1940 = vpop.f32.mrf.mxu0
  %1941 = vmatprep.mubr.bf16.mxu0 0
  %1942 = vmatmul.mubr.bf16.gmra.mxu0 %v1683
  %v1943 = vpop.f32.mrf.mxu0
  %v1944 = vpop.f32.mrf.mxu0
  %v1945 = vpop.f32.mrf.mxu0
  %v1946 = vpop.f32.mrf.mxu0
  %1947 = vmatprep.mubr.bf16.mxu0 0
  %1948 = vmatmul.mubr.bf16.gmra.mxu0 %v1686
  %v1949 = vpop.f32.mrf.mxu0
  %v1950 = vpop.f32.mrf.mxu0
  %v1951 = vpop.f32.mrf.mxu0
  %v1952 = vpop.f32.mrf.mxu0
  %1953 = vmatprep.mubr.bf16.mxu0 0
  %1954 = vmatmul.mubr.bf16.gmra.mxu0 %v1689
  %v1955 = vpop.f32.mrf.mxu0
  %v1956 = vadd.f32 %v917, %v1955
  %v1957 = vpop.f32.mrf.mxu0
  %v1958 = vpop.f32.mrf.mxu0
  %v1959 = vadd.f32 %v920, %v1958
  %v1960 = vpop.f32.mrf.mxu0
  %1961 = vmatprep.mubr.bf16.mxu0 0
  %1962 = vmatmul.mubr.bf16.gmra.mxu0 %v1692
  %v1963 = vpop.f32.mrf.mxu0
  %v1964 = vadd.f32 %v925, %v1963
  %v1965 = vpop.f32.mrf.mxu0
  %v1966 = vpop.f32.mrf.mxu0
  %v1967 = vadd.f32 %v928, %v1966
  %v1968 = vpop.f32.mrf.mxu0
  %1969 = vmatprep.mubr.bf16.mxu0 0
  %1970 = vmatmul.mubr.bf16.gmra.mxu0 %v1695
  %v1971 = vpop.f32.mrf.mxu0
  %v1972 = vadd.f32 %v933, %v1971
  %v1973 = vpop.f32.mrf.mxu0
  %v1974 = vpop.f32.mrf.mxu0
  %v1975 = vadd.f32 %v936, %v1974
  %v1976 = vpop.f32.mrf.mxu0
  %1977 = vmatprep.mubr.bf16.mxu0 0
  %1978 = vmatmul.mubr.bf16.gmra.mxu0 %v1698
  %v1979 = vpop.f32.mrf.mxu0
  %v1980 = vadd.f32 %v941, %v1979
  %v1981 = vpop.f32.mrf.mxu0
  %v1982 = vpop.f32.mrf.mxu0
  %v1983 = vadd.f32 %v944, %v1982
  %v1984 = vpop.f32.mrf.mxu0
  %1985 = vmatprep.mubr.bf16.mxu0 0
  %1986 = vmatmul.mubr.bf16.gmra.mxu0 %v1701
  %v1987 = vpop.f32.mrf.mxu0
  %v1988 = vadd.f32 %v949, %v1987
  %v1989 = vpop.f32.mrf.mxu0
  %v1990 = vpop.f32.mrf.mxu0
  %v1991 = vadd.f32 %v952, %v1990
  %v1992 = vpop.f32.mrf.mxu0
  %1993 = vmatprep.mubr.bf16.mxu0 0
  %1994 = vmatmul.mubr.bf16.gmra.mxu0 %v1704
  %v1995 = vpop.f32.mrf.mxu0
  %v1996 = vadd.f32 %v957, %v1995
  %v1997 = vpop.f32.mrf.mxu0
  %v1998 = vpop.f32.mrf.mxu0
  %v1999 = vadd.f32 %v960, %v1998
  %v2000 = vpop.f32.mrf.mxu0
  %2001 = vmatprep.mubr.bf16.mxu0 0
  %2002 = vmatmul.mubr.bf16.gmra.mxu0 %v1707
  %v2003 = vpop.f32.mrf.mxu0
  %v2004 = vadd.f32 %v965, %v2003
  %v2005 = vpop.f32.mrf.mxu0
  %v2006 = vpop.f32.mrf.mxu0
  %v2007 = vadd.f32 %v968, %v2006
  %v2008 = vpop.f32.mrf.mxu0
  %2009 = vmatprep.mubr.bf16.mxu0 0
  %2010 = vmatmul.mubr.bf16.gmra.mxu0 %v1710
  %v2011 = vpop.f32.mrf.mxu0
  %v2012 = vpop.f32.mrf.mxu0
  %v2013 = vpop.f32.mrf.mxu0
  %v2014 = vpop.f32.mrf.mxu0
  %2015 = vmatprep.mubr.bf16.mxu0 0
  %2016 = vmatmul.mubr.bf16.gmra.mxu0 %v1713
  %v2017 = vpop.f32.mrf.mxu0
  %v2018 = vpop.f32.mrf.mxu0
  %v2019 = vpop.f32.mrf.mxu0
  %v2020 = vpop.f32.mrf.mxu0
  %2021 = vmatprep.mubr.bf16.mxu0 0
  %2022 = vmatmul.mubr.bf16.gmra.mxu0 %v1716
  %v2023 = vpop.f32.mrf.mxu0
  %v2024 = vadd.f32 %v985, %v2023
  %v2025 = vpop.f32.mrf.mxu0
  %v2026 = vpop.f32.mrf.mxu0
  %v2027 = vadd.f32 %v988, %v2026
  %v2028 = vpop.f32.mrf.mxu0
  %2029 = vmatprep.mubr.bf16.mxu0 0
  %2030 = vmatmul.mubr.bf16.gmra.mxu0 %v1719
  %v2031 = vpop.f32.mrf.mxu0
  %v2032 = vadd.f32 %v993, %v2031
  %v2033 = vpop.f32.mrf.mxu0
  %v2034 = vpop.f32.mrf.mxu0
  %v2035 = vadd.f32 %v996, %v2034
  %v2036 = vpop.f32.mrf.mxu0
  %2037 = vmatprep.mubr.bf16.mxu0 0
  %2038 = vmatmul.mubr.bf16.gmra.mxu0 %v1722
  %v2039 = vpop.f32.mrf.mxu0
  %v2040 = vadd.f32 %v1001, %v2039
  %v2041 = vpop.f32.mrf.mxu0
  %v2042 = vpop.f32.mrf.mxu0
  %v2043 = vadd.f32 %v1004, %v2042
  %v2044 = vpop.f32.mrf.mxu0
  %2045 = vmatprep.mubr.bf16.mxu0 0
  %2046 = vmatmul.mubr.bf16.gmra.mxu0 %v1725
  %v2047 = vpop.f32.mrf.mxu0
  %v2048 = vadd.f32 %v1009, %v2047
  %v2049 = vpop.f32.mrf.mxu0
  %v2050 = vpop.f32.mrf.mxu0
  %v2051 = vadd.f32 %v1012, %v2050
  %v2052 = vpop.f32.mrf.mxu0
  %2053 = vmatprep.mubr.bf16.mxu0 0
  %2054 = vmatmul.mubr.bf16.gmra.mxu0 %v1728
  %v2055 = vpop.f32.mrf.mxu0
  %v2056 = vadd.f32 %v1017, %v2055
  %v2057 = vpop.f32.mrf.mxu0
  %v2058 = vpop.f32.mrf.mxu0
  %v2059 = vadd.f32 %v1020, %v2058
  %v2060 = vpop.f32.mrf.mxu0
  %2061 = vmatprep.mubr.bf16.mxu0 0
  %2062 = vmatmul.mubr.bf16.gmra.mxu0 %v1731
  %v2063 = vpop.f32.mrf.mxu0
  %v2064 = vadd.f32 %v1025, %v2063
  %v2065 = vpop.f32.mrf.mxu0
  %v2066 = vpop.f32.mrf.mxu0
  %v2067 = vadd.f32 %v1028, %v2066
  %v2068 = vpop.f32.mrf.mxu0
  %2069 = vmatprep.mubr.bf16.mxu0 0
  %2070 = vmatmul.mubr.bf16.gmra.mxu0 %v1734
  %v2071 = vpop.f32.mrf.mxu0
  %v2072 = vadd.f32 %v1033, %v2071
  %v2073 = vpop.f32.mrf.mxu0
  %v2074 = vpop.f32.mrf.mxu0
  %v2075 = vadd.f32 %v1036, %v2074
  %v2076 = vpop.f32.mrf.mxu0
  %2077 = vmatprep.mubr.bf16.mxu0 0
  %2078 = vmatmul.mubr.bf16.gmra.mxu0 %v1737
  %v2079 = vpop.f32.mrf.mxu0
  %v2080 = vpop.f32.mrf.mxu0
  %v2081 = vpop.f32.mrf.mxu0
  %v2082 = vpop.f32.mrf.mxu0
  %2083 = vmatprep.mubr.bf16.mxu0 0
  %2084 = vmatmul.mubr.bf16.gmra.mxu0 %v1740
  %v2085 = vpop.f32.mrf.mxu0
  %v2086 = vpop.f32.mrf.mxu0
  %v2087 = vpop.f32.mrf.mxu0
  %v2088 = vpop.f32.mrf.mxu0
  %2089 = vmatprep.mubr.bf16.mxu0 0
  %2090 = vmatmul.mubr.bf16.gmra.mxu0 %v1743
  %v2091 = vpop.f32.mrf.mxu0
  %v2092 = vadd.f32 %v1053, %v2091
  %v2093 = vpop.f32.mrf.mxu0
  %v2094 = vpop.f32.mrf.mxu0
  %v2095 = vadd.f32 %v1056, %v2094
  %v2096 = vpop.f32.mrf.mxu0
  %2097 = vmatprep.mubr.bf16.mxu0 0
  %2098 = vmatmul.mubr.bf16.gmra.mxu0 %v1746
  %v2099 = vpop.f32.mrf.mxu0
  %v2100 = vadd.f32 %v1061, %v2099
  %v2101 = vpop.f32.mrf.mxu0
  %v2102 = vpop.f32.mrf.mxu0
  %v2103 = vadd.f32 %v1064, %v2102
  %v2104 = vpop.f32.mrf.mxu0
  %2105 = vmatprep.mubr.bf16.mxu0 0
  %2106 = vmatmul.mubr.bf16.gmra.mxu0 %v1749
  %v2107 = vpop.f32.mrf.mxu0
  %v2108 = vadd.f32 %v1069, %v2107
  %v2109 = vpop.f32.mrf.mxu0
  %v2110 = vpop.f32.mrf.mxu0
  %v2111 = vadd.f32 %v1072, %v2110
  %v2112 = vpop.f32.mrf.mxu0
  %2113 = vmatprep.mubr.bf16.mxu0 0
  %2114 = vmatmul.mubr.bf16.gmra.mxu0 %v1752
  %v2115 = vpop.f32.mrf.mxu0
  %v2116 = vadd.f32 %v1077, %v2115
  %v2117 = vpop.f32.mrf.mxu0
  %v2118 = vpop.f32.mrf.mxu0
  %v2119 = vadd.f32 %v1080, %v2118
  %v2120 = vpop.f32.mrf.mxu0
  %2121 = vmatprep.mubr.bf16.mxu0 0
  %2122 = vmatmul.mubr.bf16.gmra.mxu0 %v1755
  %v2123 = vpop.f32.mrf.mxu0
  %v2124 = vadd.f32 %v1085, %v2123
  %v2125 = vpop.f32.mrf.mxu0
  %v2126 = vpop.f32.mrf.mxu0
  %v2127 = vadd.f32 %v1088, %v2126
  %v2128 = vpop.f32.mrf.mxu0
  %2129 = vmatprep.mubr.bf16.mxu0 0
  %2130 = vmatmul.mubr.bf16.gmra.mxu0 %v1758
  %v2131 = vpop.f32.mrf.mxu0
  %v2132 = vadd.f32 %v1093, %v2131
  %v2133 = vpop.f32.mrf.mxu0
  %v2134 = vpop.f32.mrf.mxu0
  %v2135 = vadd.f32 %v1096, %v2134
  %v2136 = vpop.f32.mrf.mxu0
  %2137 = vmatprep.mubr.bf16.mxu0 0
  %2138 = vmatmul.mubr.bf16.gmra.mxu0 %v1761
  %v2139 = vpop.f32.mrf.mxu0
  %v2140 = vadd.f32 %v1101, %v2139
  %v2141 = vpop.f32.mrf.mxu0
  %v2142 = vpop.f32.mrf.mxu0
  %v2143 = vadd.f32 %v1104, %v2142
  %v2144 = vpop.f32.mrf.mxu0
  %2145 = vmatprep.mubr.bf16.mxu0 0
  %2146 = vmatmul.mubr.bf16.gmra.mxu0 %v1764
  %v2147 = vpop.f32.mrf.mxu0
  %v2148 = vpop.f32.mrf.mxu0
  %v2149 = vpop.f32.mrf.mxu0
  %v2150 = vpop.f32.mrf.mxu0
  %2151 = vmatprep.mubr.bf16.mxu0 0
  %2152 = vmatmul.mubr.bf16.gmra.mxu0 %v1767
  %v2153 = vpop.f32.mrf.mxu0
  %v2154 = vpop.f32.mrf.mxu0
  %v2155 = vpop.f32.mrf.mxu0
  %v2156 = vpop.f32.mrf.mxu0
  %2157 = vmatprep.mubr.bf16.mxu0 0
  %2158 = vmatmul.mubr.bf16.gmra.mxu0 %v1770
  %v2159 = vpop.f32.mrf.mxu0
  %v2160 = vadd.f32 %v1121, %v2159
  %v2161 = vpop.f32.mrf.mxu0
  %v2162 = vpop.f32.mrf.mxu0
  %v2163 = vadd.f32 %v1124, %v2162
  %v2164 = vpop.f32.mrf.mxu0
  %2165 = vmatprep.mubr.bf16.mxu0 0
  %2166 = vmatmul.mubr.bf16.gmra.mxu0 %v1773
  %v2167 = vpop.f32.mrf.mxu0
  %v2168 = vadd.f32 %v1129, %v2167
  %v2169 = vpop.f32.mrf.mxu0
  %v2170 = vpop.f32.mrf.mxu0
  %v2171 = vadd.f32 %v1132, %v2170
  %v2172 = vpop.f32.mrf.mxu0
  %2173 = vmatprep.mubr.bf16.mxu0 0
  %2174 = vmatmul.mubr.bf16.gmra.mxu0 %v1776
  %v2175 = vpop.f32.mrf.mxu0
  %v2176 = vadd.f32 %v1137, %v2175
  %v2177 = vpop.f32.mrf.mxu0
  %v2178 = vpop.f32.mrf.mxu0
  %v2179 = vadd.f32 %v1140, %v2178
  %v2180 = vpop.f32.mrf.mxu0
  %2181 = vmatprep.mubr.bf16.mxu0 0
  %2182 = vmatmul.mubr.bf16.gmra.mxu0 %v1779
  %v2183 = vpop.f32.mrf.mxu0
  %v2184 = vadd.f32 %v1145, %v2183
  %v2185 = vpop.f32.mrf.mxu0
  %v2186 = vpop.f32.mrf.mxu0
  %v2187 = vadd.f32 %v1148, %v2186
  %v2188 = vpop.f32.mrf.mxu0
  %2189 = vmatprep.mubr.bf16.mxu0 0
  %2190 = vmatmul.mubr.bf16.gmra.mxu0 %v1782
  %v2191 = vpop.f32.mrf.mxu0
  %v2192 = vadd.f32 %v1153, %v2191
  %v2193 = vpop.f32.mrf.mxu0
  %v2194 = vpop.f32.mrf.mxu0
  %v2195 = vadd.f32 %v1156, %v2194
  %v2196 = vpop.f32.mrf.mxu0
  %2197 = vmatprep.mubr.bf16.mxu0 0
  %2198 = vmatmul.mubr.bf16.gmra.mxu0 %v1785
  %v2199 = vpop.f32.mrf.mxu0
  %v2200 = vadd.f32 %v1161, %v2199
  %v2201 = vpop.f32.mrf.mxu0
  %v2202 = vpop.f32.mrf.mxu0
  %v2203 = vadd.f32 %v1164, %v2202
  %v2204 = vpop.f32.mrf.mxu0
  %2205 = vmatprep.mubr.bf16.mxu0 0
  %2206 = vmatmul.mubr.bf16.gmra.mxu0 %v1788
  %v2207 = vpop.f32.mrf.mxu0
  %v2208 = vadd.f32 %v1169, %v2207
  %v2209 = vpop.f32.mrf.mxu0
  %v2210 = vpop.f32.mrf.mxu0
  %v2211 = vadd.f32 %v1172, %v2210
  %v2212 = vpop.f32.mrf.mxu0
  %2213 = vmatprep.mubr.bf16.mxu0 0
  %2214 = vmatmul.mubr.bf16.gmra.mxu0 %v1791
  %v2215 = vpop.f32.mrf.mxu0
  %v2216 = vpop.f32.mrf.mxu0
  %v2217 = vpop.f32.mrf.mxu0
  %v2218 = vpop.f32.mrf.mxu0
  %2219 = vmatprep.mubr.bf16.mxu0 0
  %2220 = vmatmul.mubr.bf16.gmra.mxu0 %v1794
  %v2221 = vpop.f32.mrf.mxu0
  %v2222 = vpop.f32.mrf.mxu0
  %v2223 = vpop.f32.mrf.mxu0
  %v2224 = vpop.f32.mrf.mxu0
  %2225 = vmatprep.mubr.bf16.mxu0 0
  %2226 = vmatmul.mubr.bf16.gmra.mxu0 %v1797
  %v2227 = vpop.f32.mrf.mxu0
  %v2228 = vadd.f32 %v1189, %v2227
  %v2229 = vpop.f32.mrf.mxu0
  %v2230 = vpop.f32.mrf.mxu0
  %v2231 = vadd.f32 %v1192, %v2230
  %v2232 = vpop.f32.mrf.mxu0
  %2233 = vmatprep.mubr.bf16.mxu0 0
  %2234 = vmatmul.mubr.bf16.gmra.mxu0 %v1800
  %v2235 = vpop.f32.mrf.mxu0
  %v2236 = vadd.f32 %v1197, %v2235
  %v2237 = vpop.f32.mrf.mxu0
  %v2238 = vpop.f32.mrf.mxu0
  %v2239 = vadd.f32 %v1200, %v2238
  %v2240 = vpop.f32.mrf.mxu0
  %2241 = vmatprep.mubr.bf16.mxu0 0
  %2242 = vmatmul.mubr.bf16.gmra.mxu0 %v1803
  %v2243 = vpop.f32.mrf.mxu0
  %v2244 = vadd.f32 %v1205, %v2243
  %v2245 = vpop.f32.mrf.mxu0
  %v2246 = vpop.f32.mrf.mxu0
  %v2247 = vadd.f32 %v1208, %v2246
  %v2248 = vpop.f32.mrf.mxu0
  %2249 = vmatprep.mubr.bf16.mxu0 0
  %2250 = vmatmul.mubr.bf16.gmra.mxu0 %v1806
  %v2251 = vpop.f32.mrf.mxu0
  %v2252 = vadd.f32 %v1213, %v2251
  %v2253 = vpop.f32.mrf.mxu0
  %v2254 = vpop.f32.mrf.mxu0
  %v2255 = vadd.f32 %v1216, %v2254
  %v2256 = vpop.f32.mrf.mxu0
  %2257 = vmatprep.mubr.bf16.mxu0 0
  %2258 = vmatmul.mubr.bf16.gmra.mxu0 %v1809
  %v2259 = vpop.f32.mrf.mxu0
  %v2260 = vadd.f32 %v1221, %v2259
  %v2261 = vpop.f32.mrf.mxu0
  %v2262 = vpop.f32.mrf.mxu0
  %v2263 = vadd.f32 %v1224, %v2262
  %v2264 = vpop.f32.mrf.mxu0
  %2265 = vmatprep.mubr.bf16.mxu0 0
  %2266 = vmatmul.mubr.bf16.gmra.mxu0 %v1812
  %v2267 = vpop.f32.mrf.mxu0
  %v2268 = vadd.f32 %v1229, %v2267
  %v2269 = vpop.f32.mrf.mxu0
  %v2270 = vpop.f32.mrf.mxu0
  %v2271 = vadd.f32 %v1232, %v2270
  %v2272 = vpop.f32.mrf.mxu0
  %2273 = vmatprep.mubr.bf16.mxu0 0
  %2274 = vmatmul.mubr.bf16.gmra.mxu0 %v1815
  %v2275 = vpop.f32.mrf.mxu0
  %v2276 = vadd.f32 %v1237, %v2275
  %v2277 = vpop.f32.mrf.mxu0
  %v2278 = vpop.f32.mrf.mxu0
  %v2279 = vadd.f32 %v1240, %v2278
  %v2280 = vpop.f32.mrf.mxu0
  %2281 = vmatprep.mubr.bf16.mxu0 0
  %2282 = vmatmul.mubr.bf16.gmra.mxu0 %v1818
  %v2283 = vpop.f32.mrf.mxu0
  %v2284 = vpop.f32.mrf.mxu0
  %v2285 = vpop.f32.mrf.mxu0
  %v2286 = vpop.f32.mrf.mxu0
  %2287 = vmatprep.mubr.bf16.mxu0 0
  %2288 = vmatmul.mubr.bf16.gmra.mxu0 %v1821
  %v2289 = vpop.f32.mrf.mxu0
  %v2290 = vpop.f32.mrf.mxu0
  %v2291 = vpop.f32.mrf.mxu0
  %v2292 = vpop.f32.mrf.mxu0
  %2293 = vmatprep.mubr.bf16.mxu0 0
  %2294 = vmatmul.mubr.bf16.gmra.mxu0 %v1824
  %v2295 = vpop.f32.mrf.mxu0
  %v2296 = vadd.f32 %v1257, %v2295
  %v2297 = vpop.f32.mrf.mxu0
  %v2298 = vpop.f32.mrf.mxu0
  %v2299 = vadd.f32 %v1260, %v2298
  %v2300 = vpop.f32.mrf.mxu0
  %2301 = vmatprep.mubr.bf16.mxu0 0
  %2302 = vmatmul.mubr.bf16.gmra.mxu0 %v1827
  %v2303 = vpop.f32.mrf.mxu0
  %v2304 = vadd.f32 %v1265, %v2303
  %v2305 = vpop.f32.mrf.mxu0
  %v2306 = vpop.f32.mrf.mxu0
  %v2307 = vadd.f32 %v1268, %v2306
  %v2308 = vpop.f32.mrf.mxu0
  %2309 = vmatprep.mubr.bf16.mxu0 0
  %2310 = vmatmul.mubr.bf16.gmra.mxu0 %v1830
  %v2311 = vpop.f32.mrf.mxu0
  %v2312 = vadd.f32 %v1273, %v2311
  %v2313 = vpop.f32.mrf.mxu0
  %v2314 = vpop.f32.mrf.mxu0
  %v2315 = vadd.f32 %v1276, %v2314
  %v2316 = vpop.f32.mrf.mxu0
  %2317 = vmatprep.mubr.bf16.mxu0 0
  %2318 = vmatmul.mubr.bf16.gmra.mxu0 %v1833
  %v2319 = vpop.f32.mrf.mxu0
  %v2320 = vadd.f32 %v1281, %v2319
  %v2321 = vpop.f32.mrf.mxu0
  %v2322 = vpop.f32.mrf.mxu0
  %v2323 = vadd.f32 %v1284, %v2322
  %v2324 = vpop.f32.mrf.mxu0
  %2325 = vmatprep.mubr.bf16.mxu0 0
  %2326 = vmatmul.mubr.bf16.gmra.mxu0 %v1836
  %v2327 = vpop.f32.mrf.mxu0
  %v2328 = vadd.f32 %v1289, %v2327
  %v2329 = vpop.f32.mrf.mxu0
  %v2330 = vpop.f32.mrf.mxu0
  %v2331 = vadd.f32 %v1292, %v2330
  %v2332 = vpop.f32.mrf.mxu0
  %2333 = vmatprep.mubr.bf16.mxu0 0
  %2334 = vmatmul.mubr.bf16.gmra.mxu0 %v1839
  %v2335 = vpop.f32.mrf.mxu0
  %v2336 = vadd.f32 %v1297, %v2335
  %v2337 = vpop.f32.mrf.mxu0
  %v2338 = vpop.f32.mrf.mxu0
  %v2339 = vadd.f32 %v1300, %v2338
  %v2340 = vpop.f32.mrf.mxu0
  %2341 = vmatprep.mubr.bf16.mxu0 0
  %2342 = vmatmul.mubr.bf16.gmra.mxu0 %v1842
  %v2343 = vpop.f32.mrf.mxu0
  %v2344 = vadd.f32 %v1305, %v2343
  %v2345 = vpop.f32.mrf.mxu0
  %v2346 = vpop.f32.mrf.mxu0
  %v2347 = vadd.f32 %v1308, %v2346
  %v2348 = vpop.f32.mrf.mxu0
  %2349 = vmatprep.mubr.bf16.mxu0 0
  %2350 = vmatmul.mubr.bf16.gmra.mxu0 %v1845
  %v2351 = vpop.f32.mrf.mxu0
  %v2352 = vpop.f32.mrf.mxu0
  %v2353 = vpop.f32.mrf.mxu0
  %v2354 = vpop.f32.mrf.mxu0
  %2355 = vmatprep.mubr.bf16.mxu0 0
  %2356 = vmatmul.mubr.bf16.gmra.mxu0 %v1848
  %v2357 = vpop.f32.mrf.mxu0
  %v2358 = vpop.f32.mrf.mxu0
  %v2359 = vpop.f32.mrf.mxu0
  %v2360 = vpop.f32.mrf.mxu0
  %2361 = vmatprep.mubr.bf16.mxu0 0
  %2362 = vmatmul.mubr.bf16.gmra.mxu0 %v1851
  %v2363 = vpop.f32.mrf.mxu0
  %v2364 = vpop.f32.mrf.mxu0
  %v2365 = vpop.f32.mrf.mxu0
  %v2366 = vpop.f32.mrf.mxu0
  %2367 = vdwg.mxu0
  %s2368 = scalar_lea.vmem %s0, 16
  %v2369 = vld [vmem:[%s2368] sm:$0xf]
  %v2370 = vld [vmem:[%s2368 + $0x4] sm:$0xf]
  %v2371 = vld [vmem:[%s2368 + $0x8] sm:$0xf]
  %v2372 = vld [vmem:[%s2368 + $0xc] sm:$0xf]
  %v2373 = vld [vmem:[%s2368 + $0x10] sm:$0xf]
  %v2374 = vld [vmem:[%s2368 + $0x14] sm:$0xf]
  %v2375 = vld [vmem:[%s2368 + $0x18] sm:$0xf]
  %v2376 = vld [vmem:[%s2368 + $0x1c] sm:$0xf]
  %v2377 = vld [vmem:[%s2368 + $0x20] sm:$0xf]
  %v2378 = vld [vmem:[%s2368 + $0x24] sm:$0xf]
  %v2379 = vld [vmem:[%s2368 + $0x28] sm:$0xf]
  %v2380 = vld [vmem:[%s2368 + $0x2c] sm:$0xf]
  %v2381 = vld [vmem:[%s2368 + $0x30] sm:$0xf]
  %v2382 = vld [vmem:[%s2368 + $0x34] sm:$0xf]
  %v2383 = vld [vmem:[%s2368 + $0x38] sm:$0xf]
  %v2384 = vld [vmem:[%s2368 + $0x3c] sm:$0xf]
  %v2385 = vld [vmem:[%s2368 + $0x40] sm:$0xf]
  %v2386 = vld [vmem:[%s2368 + $0x44] sm:$0xf]
  %v2387 = vld [vmem:[%s2368 + $0x48] sm:$0xf]
  %v2388 = vld [vmem:[%s2368 + $0x4c] sm:$0xf]
  %v2389 = vld [vmem:[%s2368 + $0x50] sm:$0xf]
  %v2390 = vld [vmem:[%s2368 + $0x54] sm:$0xf]
  %v2391 = vld [vmem:[%s2368 + $0x58] sm:$0xf]
  %v2392 = vld [vmem:[%s2368 + $0x5c] sm:$0xf]
  %v2393 = vld [vmem:[%s2368 + $0x60] sm:$0xf]
  %v2394 = vld [vmem:[%s2368 + $0x64] sm:$0xf]
  %v2395 = vld [vmem:[%s2368 + $0x68] sm:$0xf]
  %v2396 = vld [vmem:[%s2368 + $0x6c] sm:$0xf]
  %v2397 = vld [vmem:[%s2368 + $0x70] sm:$0xf]
  %v2398 = vld [vmem:[%s2368 + $0x74] sm:$0xf]
  %v2399 = vld [vmem:[%s2368 + $0x78] sm:$0xf]
  %v2400 = vld [vmem:[%s2368 + $0x7c] sm:$0xf]
  %v2401 = vld [vmem:[%s2368 + $0x80] sm:$0xf]
  %v2402 = vld [vmem:[%s2368 + $0x84] sm:$0xf]
  %v2403 = vld [vmem:[%s2368 + $0x88] sm:$0xf]
  %v2404 = vld [vmem:[%s2368 + $0x8c] sm:$0xf]
  %v2405 = vld [vmem:[%s2368 + $0x90] sm:$0xf]
  %v2406 = vld [vmem:[%s2368 + $0x94] sm:$0xf]
  %v2407 = vld [vmem:[%s2368 + $0x98] sm:$0xf]
  %v2408 = vld [vmem:[%s2368 + $0x9c] sm:$0xf]
  %v2409 = vld [vmem:[%s2368 + $0xa0] sm:$0xf]
  %v2410 = vld [vmem:[%s2368 + $0xa4] sm:$0xf]
  %v2411 = vld [vmem:[%s2368 + $0xa8] sm:$0xf]
  %v2412 = vld [vmem:[%s2368 + $0xac] sm:$0xf]
  %v2413 = vld [vmem:[%s2368 + $0xb0] sm:$0xf]
  %v2414 = vld [vmem:[%s2368 + $0xb4] sm:$0xf]
  %v2415 = vld [vmem:[%s2368 + $0xb8] sm:$0xf]
  %v2416 = vld [vmem:[%s2368 + $0xbc] sm:$0xf]
  %v2417 = vld [vmem:[%s2368 + $0xc0] sm:$0xf]
  %v2418 = vld [vmem:[%s2368 + $0xc4] sm:$0xf]
  %v2419 = vld [vmem:[%s2368 + $0xc8] sm:$0xf]
  %v2420 = vld [vmem:[%s2368 + $0xcc] sm:$0xf]
  %v2421 = vld [vmem:[%s2368 + $0xd0] sm:$0xf]
  %v2422 = vld [vmem:[%s2368 + $0xd4] sm:$0xf]
  %v2423 = vld [vmem:[%s2368 + $0xd8] sm:$0xf]
  %v2424 = vld [vmem:[%s2368 + $0xdc] sm:$0xf]
  %v2425 = vld [vmem:[%s2368 + $0xe0] sm:$0xf]
  %v2426 = vld [vmem:[%s2368 + $0xe4] sm:$0xf]
  %v2427 = vld [vmem:[%s2368 + $0xe8] sm:$0xf]
  %v2428 = vld [vmem:[%s2368 + $0xec] sm:$0xf]
  %v2429 = vld [vmem:[%s2368 + $0xf0] sm:$0xf]
  %v2430 = vld [vmem:[%s2368 + $0xf4] sm:$0xf]
  %v2431 = vld [vmem:[%s2368 + $0xf8] sm:$0xf]
  %v2432 = vld [vmem:[%s2368 + $0xfc] sm:$0xf]
  %v2433 = vld [vmem:[%s2368 + $0x100] sm:$0xf]
  %v2434 = vld [vmem:[%s2368 + $0x104] sm:$0xf]
  %v2435 = vld [vmem:[%s2368 + $0x108] sm:$0xf]
  %v2436 = vld [vmem:[%s2368 + $0x10c] sm:$0xf]
  %v2437 = vld [vmem:[%s2368 + $0x110] sm:$0xf]
  %v2438 = vld [vmem:[%s2368 + $0x114] sm:$0xf]
  %v2439 = vld [vmem:[%s2368 + $0x118] sm:$0xf]
  %v2440 = vld [vmem:[%s2368 + $0x11c] sm:$0xf]
  %v2441 = vld [vmem:[%s2368 + $0x120] sm:$0xf]
  %v2442 = vld [vmem:[%s2368 + $0x124] sm:$0xf]
  %v2443 = vld [vmem:[%s2368 + $0x128] sm:$0xf]
  %v2444 = vld [vmem:[%s2368 + $0x12c] sm:$0xf]
  %v2445 = vld [vmem:[%s2368 + $0x130] sm:$0xf]
  %v2446 = vld [vmem:[%s2368 + $0x134] sm:$0xf]
  %v2447 = vld [vmem:[%s2368 + $0x138] sm:$0xf]
  %v2448 = vld [vmem:[%s2368 + $0x13c] sm:$0xf]
  %v2449 = vld [vmem:[%s2368 + $0x140] sm:$0xf]
  %v2450 = vld [vmem:[%s2368 + $0x144] sm:$0xf]
  %v2451 = vld [vmem:[%s2368 + $0x148] sm:$0xf]
  %v2452 = vld [vmem:[%s2368 + $0x14c] sm:$0xf]
  %v2453 = vld [vmem:[%s2368 + $0x150] sm:$0xf]
  %v2454 = vld [vmem:[%s2368 + $0x154] sm:$0xf]
  %v2455 = vld [vmem:[%s2368 + $0x158] sm:$0xf]
  %v2456 = vld [vmem:[%s2368 + $0x15c] sm:$0xf]
  %v2457 = vld [vmem:[%s2368 + $0x160] sm:$0xf]
  %v2458 = vld [vmem:[%s2368 + $0x164] sm:$0xf]
  %v2459 = vld [vmem:[%s2368 + $0x168] sm:$0xf]
  %v2460 = vld [vmem:[%s2368 + $0x16c] sm:$0xf]
  %v2461 = vld [vmem:[%s2368 + $0x170] sm:$0xf]
  %v2462 = vld [vmem:[%s2368 + $0x174] sm:$0xf]
  %v2463 = vld [vmem:[%s2368 + $0x178] sm:$0xf]
  %v2464 = vld [vmem:[%s2368 + $0x17c] sm:$0xf]
  %v2465 = vld [vmem:[%s2368 + $0x180] sm:$0xf]
  %v2466 = vld [vmem:[%s2368 + $0x184] sm:$0xf]
  %v2467 = vld [vmem:[%s2368 + $0x188] sm:$0xf]
  %v2468 = vld [vmem:[%s2368 + $0x18c] sm:$0xf]
  %v2469 = vld [vmem:[%s2368 + $0x190] sm:$0xf]
  %v2470 = vld [vmem:[%s2368 + $0x194] sm:$0xf]
  %v2471 = vld [vmem:[%s2368 + $0x198] sm:$0xf]
  %v2472 = vld [vmem:[%s2368 + $0x19c] sm:$0xf]
  %v2473 = vld [vmem:[%s2368 + $0x1a0] sm:$0xf]
  %v2474 = vld [vmem:[%s2368 + $0x1a4] sm:$0xf]
  %v2475 = vld [vmem:[%s2368 + $0x1a8] sm:$0xf]
  %v2476 = vld [vmem:[%s2368 + $0x1ac] sm:$0xf]
  %v2477 = vld [vmem:[%s2368 + $0x1b0] sm:$0xf]
  %v2478 = vld [vmem:[%s2368 + $0x1b4] sm:$0xf]
  %v2479 = vld [vmem:[%s2368 + $0x1b8] sm:$0xf]
  %v2480 = vld [vmem:[%s2368 + $0x1bc] sm:$0xf]
  %v2481 = vld [vmem:[%s2368 + $0x1c0] sm:$0xf]
  %v2482 = vld [vmem:[%s2368 + $0x1c4] sm:$0xf]
  %v2483 = vld [vmem:[%s2368 + $0x1c8] sm:$0xf]
  %v2484 = vld [vmem:[%s2368 + $0x1cc] sm:$0xf]
  %v2485 = vld [vmem:[%s2368 + $0x1d0] sm:$0xf]
  %v2486 = vld [vmem:[%s2368 + $0x1d4] sm:$0xf]
  %v2487 = vld [vmem:[%s2368 + $0x1d8] sm:$0xf]
  %v2488 = vld [vmem:[%s2368 + $0x1dc] sm:$0xf]
  %v2489 = vld [vmem:[%s2368 + $0x1e0] sm:$0xf]
  %v2490 = vld [vmem:[%s2368 + $0x1e4] sm:$0xf]
  %v2491 = vld [vmem:[%s2368 + $0x1e8] sm:$0xf]
  %v2492 = vld [vmem:[%s2368 + $0x1ec] sm:$0xf]
  %v2493 = vld [vmem:[%s2368 + $0x1f0] sm:$0xf]
  %v2494 = vld [vmem:[%s2368 + $0x1f4] sm:$0xf]
  %v2495 = vld [vmem:[%s2368 + $0x1f8] sm:$0xf]
  %v2496 = vld [vmem:[%s2368 + $0x1fc] sm:$0xf]
  %s2497 = scalar_lea.vmem %s1, 32
  %v2498 = vld [vmem:[%s2497] sm:$0xf]
  %v2499 = vld [vmem:[%s2497 + $0x4] sm:$0xf]
  %v2500 = vld [vmem:[%s2497 + $0x8] sm:$0xf]
  %v2501 = vld [vmem:[%s2497 + $0xc] sm:$0xf]
  %v2630 = vunpack.c.l.b16 %v2369
  %v2631 = vunpack.c.l.b16 %v2370
  %v2632 = vunpack.c.l.b16 %v2371
  %v2633 = vunpack.c.l.b16 %v2372
  %v2634 = vunpack.c.l.b16 %v2373
  %v2635 = vunpack.c.l.b16 %v2374
  %v2636 = vunpack.c.l.b16 %v2375
  %v2637 = vunpack.c.l.b16 %v2376
  %v2638 = vunpack.c.l.b16 %v2377
  %v2639 = vunpack.c.l.b16 %v2378
  %v2640 = vunpack.c.l.b16 %v2379
  %v2641 = vunpack.c.l.b16 %v2380
  %v2642 = vunpack.c.l.b16 %v2381
  %v2643 = vunpack.c.l.b16 %v2382
  %v2644 = vunpack.c.l.b16 %v2383
  %v2645 = vunpack.c.l.b16 %v2384
  %v2646 = vunpack.c.l.b16 %v2385
  %v2647 = vunpack.c.l.b16 %v2386
  %v2648 = vunpack.c.l.b16 %v2387
  %v2649 = vunpack.c.l.b16 %v2388
  %v2650 = vunpack.c.l.b16 %v2389
  %v2651 = vunpack.c.l.b16 %v2390
  %v2652 = vunpack.c.l.b16 %v2391
  %v2653 = vunpack.c.l.b16 %v2392
  %v2654 = vunpack.c.l.b16 %v2393
  %v2655 = vunpack.c.l.b16 %v2394
  %v2656 = vunpack.c.l.b16 %v2395
  %v2657 = vunpack.c.l.b16 %v2396
  %v2658 = vunpack.c.l.b16 %v2397
  %v2659 = vunpack.c.l.b16 %v2398
  %v2660 = vunpack.c.l.b16 %v2399
  %v2661 = vunpack.c.l.b16 %v2400
  %v2662 = vunpack.c.l.b16 %v2401
  %v2663 = vunpack.c.l.b16 %v2402
  %v2664 = vunpack.c.l.b16 %v2403
  %v2665 = vunpack.c.l.b16 %v2404
  %v2666 = vunpack.c.l.b16 %v2405
  %v2667 = vunpack.c.l.b16 %v2406
  %v2668 = vunpack.c.l.b16 %v2407
  %v2669 = vunpack.c.l.b16 %v2408
  %v2670 = vunpack.c.l.b16 %v2409
  %v2671 = vunpack.c.l.b16 %v2410
  %v2672 = vunpack.c.l.b16 %v2411
  %v2673 = vunpack.c.l.b16 %v2412
  %v2674 = vunpack.c.l.b16 %v2413
  %v2675 = vunpack.c.l.b16 %v2414
  %v2676 = vunpack.c.l.b16 %v2415
  %v2677 = vunpack.c.l.b16 %v2416
  %v2678 = vunpack.c.l.b16 %v2417
  %v2679 = vunpack.c.l.b16 %v2418
  %v2680 = vunpack.c.l.b16 %v2419
  %v2681 = vunpack.c.l.b16 %v2420
  %v2682 = vunpack.c.l.b16 %v2421
  %v2683 = vunpack.c.l.b16 %v2422
  %v2684 = vunpack.c.l.b16 %v2423
  %v2685 = vunpack.c.l.b16 %v2424
  %v2686 = vunpack.c.l.b16 %v2425
  %v2687 = vunpack.c.l.b16 %v2426
  %v2688 = vunpack.c.l.b16 %v2427
  %v2689 = vunpack.c.l.b16 %v2428
  %v2690 = vunpack.c.l.b16 %v2429
  %v2691 = vunpack.c.l.b16 %v2430
  %v2692 = vunpack.c.l.b16 %v2431
  %v2693 = vunpack.c.l.b16 %v2432
  %v2694 = vunpack.c.l.b16 %v2433
  %v2695 = vunpack.c.l.b16 %v2434
  %v2696 = vunpack.c.l.b16 %v2435
  %v2697 = vunpack.c.l.b16 %v2436
  %v2698 = vunpack.c.l.b16 %v2437
  %v2699 = vunpack.c.l.b16 %v2438
  %v2700 = vunpack.c.l.b16 %v2439
  %v2701 = vunpack.c.l.b16 %v2440
  %v2702 = vunpack.c.l.b16 %v2441
  %v2703 = vunpack.c.l.b16 %v2442
  %v2704 = vunpack.c.l.b16 %v2443
  %v2705 = vunpack.c.l.b16 %v2444
  %v2706 = vunpack.c.l.b16 %v2445
  %v2707 = vunpack.c.l.b16 %v2446
  %v2708 = vunpack.c.l.b16 %v2447
  %v2709 = vunpack.c.l.b16 %v2448
  %v2710 = vunpack.c.l.b16 %v2449
  %v2711 = vunpack.c.l.b16 %v2450
  %v2712 = vunpack.c.l.b16 %v2451
  %v2713 = vunpack.c.l.b16 %v2452
  %v2714 = vunpack.c.l.b16 %v2453
  %v2715 = vunpack.c.l.b16 %v2454
  %v2716 = vunpack.c.l.b16 %v2455
  %v2717 = vunpack.c.l.b16 %v2456
  %v2718 = vunpack.c.l.b16 %v2457
  %v2719 = vunpack.c.l.b16 %v2458
  %v2720 = vunpack.c.l.b16 %v2459
  %v2721 = vunpack.c.l.b16 %v2460
  %v2722 = vunpack.c.l.b16 %v2461
  %v2723 = vunpack.c.l.b16 %v2462
  %v2724 = vunpack.c.l.b16 %v2463
  %v2725 = vunpack.c.l.b16 %v2464
  %v2726 = vunpack.c.l.b16 %v2465
  %v2727 = vunpack.c.l.b16 %v2466
  %v2728 = vunpack.c.l.b16 %v2467
  %v2729 = vunpack.c.l.b16 %v2468
  %v2730 = vunpack.c.l.b16 %v2469
  %v2731 = vunpack.c.l.b16 %v2470
  %v2732 = vunpack.c.l.b16 %v2471
  %v2733 = vunpack.c.l.b16 %v2472
  %v2734 = vunpack.c.l.b16 %v2473
  %v2735 = vunpack.c.l.b16 %v2474
  %v2736 = vunpack.c.l.b16 %v2475
  %v2737 = vunpack.c.l.b16 %v2476
  %v2738 = vunpack.c.l.b16 %v2477
  %v2739 = vunpack.c.l.b16 %v2478
  %v2740 = vunpack.c.l.b16 %v2479
  %v2741 = vunpack.c.l.b16 %v2480
  %v2742 = vunpack.c.l.b16 %v2481
  %v2743 = vunpack.c.l.b16 %v2482
  %v2744 = vunpack.c.l.b16 %v2483
  %v2745 = vunpack.c.l.b16 %v2484
  %v2746 = vunpack.c.l.b16 %v2485
  %v2747 = vunpack.c.l.b16 %v2486
  %v2748 = vunpack.c.l.b16 %v2487
  %v2749 = vunpack.c.l.b16 %v2488
  %v2750 = vunpack.c.l.b16 %v2489
  %v2751 = vunpack.c.l.b16 %v2490
  %v2752 = vunpack.c.l.b16 %v2491
  %v2753 = vunpack.c.l.b16 %v2492
  %v2754 = vunpack.c.l.b16 %v2493
  %v2755 = vunpack.c.l.b16 %v2494
  %v2756 = vunpack.c.l.b16 %v2495
  %v2757 = vunpack.c.l.b16 %v2496
  %v2758 = vpack.c.b16 %v2631, %v2630
  %v2759 = vpack.c.b16 %v2633, %v2632
  %v2760 = vpack.c.b16 %v2635, %v2634
  %v2761 = vpack.c.b16 %v2637, %v2636
  %v2762 = vpack.c.b16 %v2639, %v2638
  %v2763 = vpack.c.b16 %v2641, %v2640
  %v2764 = vpack.c.b16 %v2643, %v2642
  %v2765 = vpack.c.b16 %v2645, %v2644
  %v2766 = vpack.c.b16 %v2647, %v2646
  %v2767 = vpack.c.b16 %v2649, %v2648
  %v2768 = vpack.c.b16 %v2651, %v2650
  %v2769 = vpack.c.b16 %v2653, %v2652
  %v2770 = vpack.c.b16 %v2655, %v2654
  %v2771 = vpack.c.b16 %v2657, %v2656
  %v2772 = vpack.c.b16 %v2659, %v2658
  %v2773 = vpack.c.b16 %v2661, %v2660
  %v2774 = vpack.c.b16 %v2663, %v2662
  %v2775 = vpack.c.b16 %v2665, %v2664
  %v2776 = vpack.c.b16 %v2667, %v2666
  %v2777 = vpack.c.b16 %v2669, %v2668
  %v2778 = vpack.c.b16 %v2671, %v2670
  %v2779 = vpack.c.b16 %v2673, %v2672
  %v2780 = vpack.c.b16 %v2675, %v2674
  %v2781 = vpack.c.b16 %v2677, %v2676
  %v2782 = vpack.c.b16 %v2679, %v2678
  %v2783 = vpack.c.b16 %v2681, %v2680
  %v2784 = vpack.c.b16 %v2683, %v2682
  %v2785 = vpack.c.b16 %v2685, %v2684
  %v2786 = vpack.c.b16 %v2687, %v2686
  %v2787 = vpack.c.b16 %v2689, %v2688
  %v2788 = vpack.c.b16 %v2691, %v2690
  %v2789 = vpack.c.b16 %v2693, %v2692
  %v2790 = vpack.c.b16 %v2695, %v2694
  %v2791 = vpack.c.b16 %v2697, %v2696
  %v2792 = vpack.c.b16 %v2699, %v2698
  %v2793 = vpack.c.b16 %v2701, %v2700
  %v2794 = vpack.c.b16 %v2703, %v2702
  %v2795 = vpack.c.b16 %v2705, %v2704
  %v2796 = vpack.c.b16 %v2707, %v2706
  %v2797 = vpack.c.b16 %v2709, %v2708
  %v2798 = vpack.c.b16 %v2711, %v2710
  %v2799 = vpack.c.b16 %v2713, %v2712
  %v2800 = vpack.c.b16 %v2715, %v2714
  %v2801 = vpack.c.b16 %v2717, %v2716
  %v2802 = vpack.c.b16 %v2719, %v2718
  %v2803 = vpack.c.b16 %v2721, %v2720
  %v2804 = vpack.c.b16 %v2723, %v2722
  %v2805 = vpack.c.b16 %v2725, %v2724
  %v2806 = vpack.c.b16 %v2727, %v2726
  %v2807 = vpack.c.b16 %v2729, %v2728
  %v2808 = vpack.c.b16 %v2731, %v2730
  %v2809 = vpack.c.b16 %v2733, %v2732
  %v2810 = vpack.c.b16 %v2735, %v2734
  %v2811 = vpack.c.b16 %v2737, %v2736
  %v2812 = vpack.c.b16 %v2739, %v2738
  %v2813 = vpack.c.b16 %v2741, %v2740
  %v2814 = vpack.c.b16 %v2743, %v2742
  %v2815 = vpack.c.b16 %v2745, %v2744
  %v2816 = vpack.c.b16 %v2747, %v2746
  %v2817 = vpack.c.b16 %v2749, %v2748
  %v2818 = vpack.c.b16 %v2751, %v2750
  %v2819 = vpack.c.b16 %v2753, %v2752
  %v2820 = vpack.c.b16 %v2755, %v2754
  %v2821 = vpack.c.b16 %v2757, %v2756
  %v2826 = vunpack.c.l.b16 %v2498
  %v2827 = vunpack.c.l.b16 %v2499
  %v2828 = vunpack.c.l.b16 %v2500
  %v2829 = vunpack.c.l.b16 %v2501
  %v2830 = vpack.c.b16 %v2827, %v2826
  %v2831 = vpack.c.b16 %v2829, %v2828
  %v2835 = vsel %vm621, %v2758, 0
  %v2838 = vsel %vm621, %v2759, 0
  %v2841 = vsel %vm621, %v2760, 0
  %v2844 = vsel %vm621, %v2761, 0
  %v2847 = vsel %vm621, %v2762, 0
  %v2850 = vsel %vm621, %v2763, 0
  %v2853 = vsel %vm621, %v2764, 0
  %v2856 = vsel %vm621, %v2765, 0
  %v2859 = vsel %vm621, %v2766, 0
  %v2862 = vsel %vm621, %v2767, 0
  %v2865 = vsel %vm621, %v2768, 0
  %v2868 = vsel %vm621, %v2769, 0
  %v2871 = vsel %vm621, %v2770, 0
  %v2874 = vsel %vm621, %v2771, 0
  %v2877 = vsel %vm621, %v2772, 0
  %v2880 = vsel %vm621, %v2773, 0
  %v2883 = vsel %vm621, %v2774, 0
  %v2886 = vsel %vm621, %v2775, 0
  %v2889 = vsel %vm621, %v2776, 0
  %v2892 = vsel %vm621, %v2777, 0
  %v2895 = vsel %vm621, %v2778, 0
  %v2898 = vsel %vm621, %v2779, 0
  %v2901 = vsel %vm621, %v2780, 0
  %v2904 = vsel %vm621, %v2781, 0
  %v2907 = vsel %vm621, %v2782, 0
  %v2910 = vsel %vm621, %v2783, 0
  %v2913 = vsel %vm621, %v2784, 0
  %v2916 = vsel %vm621, %v2785, 0
  %v2919 = vsel %vm621, %v2786, 0
  %v2922 = vsel %vm621, %v2787, 0
  %v2925 = vsel %vm621, %v2788, 0
  %v2928 = vsel %vm621, %v2789, 0
  %v2931 = vsel %vm621, %v2790, 0
  %v2934 = vsel %vm621, %v2791, 0
  %v2937 = vsel %vm621, %v2792, 0
  %v2940 = vsel %vm621, %v2793, 0
  %v2943 = vsel %vm621, %v2794, 0
  %v2946 = vsel %vm621, %v2795, 0
  %v2949 = vsel %vm621, %v2796, 0
  %v2952 = vsel %vm621, %v2797, 0
  %v2955 = vsel %vm621, %v2798, 0
  %v2958 = vsel %vm621, %v2799, 0
  %v2961 = vsel %vm621, %v2800, 0
  %v2964 = vsel %vm621, %v2801, 0
  %v2967 = vsel %vm621, %v2802, 0
  %v2970 = vsel %vm621, %v2803, 0
  %v2973 = vsel %vm621, %v2804, 0
  %v2976 = vsel %vm621, %v2805, 0
  %v2979 = vsel %vm621, %v2806, 0
  %v2982 = vsel %vm621, %v2807, 0
  %v2985 = vsel %vm621, %v2808, 0
  %v2988 = vsel %vm621, %v2809, 0
  %v2991 = vsel %vm621, %v2810, 0
  %v2994 = vsel %vm621, %v2811, 0
  %v2997 = vsel %vm621, %v2812, 0
  %v3000 = vsel %vm621, %v2813, 0
  %v3003 = vsel %vm621, %v2814, 0
  %v3006 = vsel %vm621, %v2815, 0
  %v3009 = vsel %vm621, %v2816, 0
  %v3012 = vsel %vm621, %v2817, 0
  %v3015 = vsel %vm621, %v2818, 0
  %v3018 = vsel %vm621, %v2819, 0
  %v3021 = vsel %vm621, %v2820, 0
  %v3024 = vsel %vm621, %v2821, 0
  %3026 = vmatprep.subr.bf16.mxu0 0
  %3027 = vmatpush1.bf16.msra.mxu0 0
  %3028 = vmatprep.subr.bf16.mxu0 0
  %3029 = vmatpush1.bf16.msra.mxu0 0
  %3030 = vmatprep.subr.bf16.mxu0 0
  %3031 = vmatpush1.bf16.msra.mxu0 0
  %3032 = vmatprep.subr.bf16.mxu0 0
  %3033 = vmatpush1.bf16.msra.mxu0 0
  %3034 = vmatprep.subr.bf16.mxu0 0
  %3035 = vmatpush1.bf16.msra.mxu0 0
  %3036 = vmatprep.subr.bf16.mxu0 0
  %3037 = vmatpush1.bf16.msra.mxu0 0
  %3038 = vmatprep.subr.bf16.mxu0 0
  %3039 = vmatpush1.bf16.msra.mxu0 %v2831
  %3040 = vmatprep.subr.bf16.mxu0 0
  %3041 = vmatpush1.bf16.msra.mxu0 %v2830
  %3042 = vmatprep.subr.bf16.mxu0 0
  %3043 = vmatpush2.bf16.msra.mxu0 0
  %3044 = vmatprep.subr.bf16.mxu0 0
  %3045 = vmatpush2.bf16.msra.mxu0 0
  %3046 = vmatprep.subr.bf16.mxu0 0
  %3047 = vmatpush2.bf16.msra.mxu0 0
  %3048 = vmatprep.subr.bf16.mxu0 0
  %3049 = vmatpush2.bf16.msra.mxu0 0
  %3050 = vmatprep.subr.bf16.mxu0 0
  %3051 = vmatpush2.bf16.msra.mxu0 0
  %3052 = vmatprep.subr.bf16.mxu0 0
  %3053 = vmatpush2.bf16.msra.mxu0 0
  %3054 = vmatprep.subr.bf16.mxu0 0
  %3055 = vmatpush2.bf16.msra.mxu0 0
  %3056 = vmatprep.subr.bf16.mxu0 0
  %3057 = vmatpush2.bf16.msra.mxu0 0
  %3058 = vmatprep.mubr.bf16.mxu0 0
  %3059 = vmatmul.mubr.bf16.gmra.mxu0 %v2835
  %v3060 = vpop.f32.mrf.mxu0
  %v3061 = vadd.f32 0.0, %v3060
  %v3062 = vpop.f32.mrf.mxu0
  %v3063 = vpop.f32.mrf.mxu0
  %v3064 = vadd.f32 0.0, %v3063
  %v3065 = vpop.f32.mrf.mxu0
  %3066 = vmatprep.mubr.bf16.mxu0 0
  %3067 = vmatmul.mubr.bf16.gmra.mxu0 %v2838
  %v3068 = vpop.f32.mrf.mxu0
  %v3069 = vadd.f32 0.0, %v3068
  %v3070 = vpop.f32.mrf.mxu0
  %v3071 = vpop.f32.mrf.mxu0
  %v3072 = vadd.f32 0.0, %v3071
  %v3073 = vpop.f32.mrf.mxu0
  %3074 = vmatprep.mubr.bf16.mxu0 0
  %3075 = vmatmul.mubr.bf16.gmra.mxu0 %v2841
  %v3076 = vpop.f32.mrf.mxu0
  %v3077 = vadd.f32 0.0, %v3076
  %v3078 = vpop.f32.mrf.mxu0
  %v3079 = vpop.f32.mrf.mxu0
  %v3080 = vadd.f32 0.0, %v3079
  %v3081 = vpop.f32.mrf.mxu0
  %3082 = vmatprep.mubr.bf16.mxu0 0
  %3083 = vmatmul.mubr.bf16.gmra.mxu0 %v2844
  %v3084 = vpop.f32.mrf.mxu0
  %v3085 = vadd.f32 0.0, %v3084
  %v3086 = vpop.f32.mrf.mxu0
  %v3087 = vpop.f32.mrf.mxu0
  %v3088 = vadd.f32 0.0, %v3087
  %v3089 = vpop.f32.mrf.mxu0
  %3090 = vmatprep.mubr.bf16.mxu0 0
  %3091 = vmatmul.mubr.bf16.gmra.mxu0 %v2847
  %v3092 = vpop.f32.mrf.mxu0
  %v3093 = vadd.f32 0.0, %v3092
  %v3094 = vpop.f32.mrf.mxu0
  %v3095 = vpop.f32.mrf.mxu0
  %v3096 = vadd.f32 0.0, %v3095
  %v3097 = vpop.f32.mrf.mxu0
  %3098 = vmatprep.mubr.bf16.mxu0 0
  %3099 = vmatmul.mubr.bf16.gmra.mxu0 %v2850
  %v3100 = vpop.f32.mrf.mxu0
  %v3101 = vadd.f32 0.0, %v3100
  %v3102 = vpop.f32.mrf.mxu0
  %v3103 = vpop.f32.mrf.mxu0
  %v3104 = vadd.f32 0.0, %v3103
  %v3105 = vpop.f32.mrf.mxu0
  %3106 = vmatprep.mubr.bf16.mxu0 0
  %3107 = vmatmul.mubr.bf16.gmra.mxu0 %v2853
  %v3108 = vpop.f32.mrf.mxu0
  %v3109 = vadd.f32 0.0, %v3108
  %v3110 = vpop.f32.mrf.mxu0
  %v3111 = vpop.f32.mrf.mxu0
  %v3112 = vadd.f32 0.0, %v3111
  %v3113 = vpop.f32.mrf.mxu0
  %3114 = vmatprep.mubr.bf16.mxu0 0
  %3115 = vmatmul.mubr.bf16.gmra.mxu0 %v2856
  %v3116 = vpop.f32.mrf.mxu0
  %v3117 = vpop.f32.mrf.mxu0
  %v3118 = vpop.f32.mrf.mxu0
  %v3119 = vpop.f32.mrf.mxu0
  %3120 = vmatprep.mubr.bf16.mxu0 0
  %3121 = vmatmul.mubr.bf16.gmra.mxu0 %v2859
  %v3122 = vpop.f32.mrf.mxu0
  %v3123 = vpop.f32.mrf.mxu0
  %v3124 = vpop.f32.mrf.mxu0
  %v3125 = vpop.f32.mrf.mxu0
  %3126 = vmatprep.mubr.bf16.mxu0 0
  %3127 = vmatmul.mubr.bf16.gmra.mxu0 %v2862
  %v3128 = vpop.f32.mrf.mxu0
  %v3129 = vadd.f32 0.0, %v3128
  %v3130 = vpop.f32.mrf.mxu0
  %v3131 = vpop.f32.mrf.mxu0
  %v3132 = vadd.f32 0.0, %v3131
  %v3133 = vpop.f32.mrf.mxu0
  %3134 = vmatprep.mubr.bf16.mxu0 0
  %3135 = vmatmul.mubr.bf16.gmra.mxu0 %v2865
  %v3136 = vpop.f32.mrf.mxu0
  %v3137 = vadd.f32 0.0, %v3136
  %v3138 = vpop.f32.mrf.mxu0
  %v3139 = vpop.f32.mrf.mxu0
  %v3140 = vadd.f32 0.0, %v3139
  %v3141 = vpop.f32.mrf.mxu0
  %3142 = vmatprep.mubr.bf16.mxu0 0
  %3143 = vmatmul.mubr.bf16.gmra.mxu0 %v2868
  %v3144 = vpop.f32.mrf.mxu0
  %v3145 = vadd.f32 0.0, %v3144
  %v3146 = vpop.f32.mrf.mxu0
  %v3147 = vpop.f32.mrf.mxu0
  %v3148 = vadd.f32 0.0, %v3147
  %v3149 = vpop.f32.mrf.mxu0
  %3150 = vmatprep.mubr.bf16.mxu0 0
  %3151 = vmatmul.mubr.bf16.gmra.mxu0 %v2871
  %v3152 = vpop.f32.mrf.mxu0
  %v3153 = vadd.f32 0.0, %v3152
  %v3154 = vpop.f32.mrf.mxu0
  %v3155 = vpop.f32.mrf.mxu0
  %v3156 = vadd.f32 0.0, %v3155
  %v3157 = vpop.f32.mrf.mxu0
  %3158 = vmatprep.mubr.bf16.mxu0 0
  %3159 = vmatmul.mubr.bf16.gmra.mxu0 %v2874
  %v3160 = vpop.f32.mrf.mxu0
  %v3161 = vadd.f32 0.0, %v3160
  %v3162 = vpop.f32.mrf.mxu0
  %v3163 = vpop.f32.mrf.mxu0
  %v3164 = vadd.f32 0.0, %v3163
  %v3165 = vpop.f32.mrf.mxu0
  %3166 = vmatprep.mubr.bf16.mxu0 0
  %3167 = vmatmul.mubr.bf16.gmra.mxu0 %v2877
  %v3168 = vpop.f32.mrf.mxu0
  %v3169 = vadd.f32 0.0, %v3168
  %v3170 = vpop.f32.mrf.mxu0
  %v3171 = vpop.f32.mrf.mxu0
  %v3172 = vadd.f32 0.0, %v3171
  %v3173 = vpop.f32.mrf.mxu0
  %3174 = vmatprep.mubr.bf16.mxu0 0
  %3175 = vmatmul.mubr.bf16.gmra.mxu0 %v2880
  %v3176 = vpop.f32.mrf.mxu0
  %v3177 = vadd.f32 0.0, %v3176
  %v3178 = vpop.f32.mrf.mxu0
  %v3179 = vpop.f32.mrf.mxu0
  %v3180 = vadd.f32 0.0, %v3179
  %v3181 = vpop.f32.mrf.mxu0
  %3182 = vmatprep.mubr.bf16.mxu0 0
  %3183 = vmatmul.mubr.bf16.gmra.mxu0 %v2883
  %v3184 = vpop.f32.mrf.mxu0
  %v3185 = vpop.f32.mrf.mxu0
  %v3186 = vpop.f32.mrf.mxu0
  %v3187 = vpop.f32.mrf.mxu0
  %3188 = vmatprep.mubr.bf16.mxu0 0
  %3189 = vmatmul.mubr.bf16.gmra.mxu0 %v2886
  %v3190 = vpop.f32.mrf.mxu0
  %v3191 = vpop.f32.mrf.mxu0
  %v3192 = vpop.f32.mrf.mxu0
  %v3193 = vpop.f32.mrf.mxu0
  %3194 = vmatprep.mubr.bf16.mxu0 0
  %3195 = vmatmul.mubr.bf16.gmra.mxu0 %v2889
  %v3196 = vpop.f32.mrf.mxu0
  %v3197 = vadd.f32 0.0, %v3196
  %v3198 = vpop.f32.mrf.mxu0
  %v3199 = vpop.f32.mrf.mxu0
  %v3200 = vadd.f32 0.0, %v3199
  %v3201 = vpop.f32.mrf.mxu0
  %3202 = vmatprep.mubr.bf16.mxu0 0
  %3203 = vmatmul.mubr.bf16.gmra.mxu0 %v2892
  %v3204 = vpop.f32.mrf.mxu0
  %v3205 = vadd.f32 0.0, %v3204
  %v3206 = vpop.f32.mrf.mxu0
  %v3207 = vpop.f32.mrf.mxu0
  %v3208 = vadd.f32 0.0, %v3207
  %v3209 = vpop.f32.mrf.mxu0
  %3210 = vmatprep.mubr.bf16.mxu0 0
  %3211 = vmatmul.mubr.bf16.gmra.mxu0 %v2895
  %v3212 = vpop.f32.mrf.mxu0
  %v3213 = vadd.f32 0.0, %v3212
  %v3214 = vpop.f32.mrf.mxu0
  %v3215 = vpop.f32.mrf.mxu0
  %v3216 = vadd.f32 0.0, %v3215
  %v3217 = vpop.f32.mrf.mxu0
  %3218 = vmatprep.mubr.bf16.mxu0 0
  %3219 = vmatmul.mubr.bf16.gmra.mxu0 %v2898
  %v3220 = vpop.f32.mrf.mxu0
  %v3221 = vadd.f32 0.0, %v3220
  %v3222 = vpop.f32.mrf.mxu0
  %v3223 = vpop.f32.mrf.mxu0
  %v3224 = vadd.f32 0.0, %v3223
  %v3225 = vpop.f32.mrf.mxu0
  %3226 = vmatprep.mubr.bf16.mxu0 0
  %3227 = vmatmul.mubr.bf16.gmra.mxu0 %v2901
  %v3228 = vpop.f32.mrf.mxu0
  %v3229 = vadd.f32 0.0, %v3228
  %v3230 = vpop.f32.mrf.mxu0
  %v3231 = vpop.f32.mrf.mxu0
  %v3232 = vadd.f32 0.0, %v3231
  %v3233 = vpop.f32.mrf.mxu0
  %3234 = vmatprep.mubr.bf16.mxu0 0
  %3235 = vmatmul.mubr.bf16.gmra.mxu0 %v2904
  %v3236 = vpop.f32.mrf.mxu0
  %v3237 = vadd.f32 0.0, %v3236
  %v3238 = vpop.f32.mrf.mxu0
  %v3239 = vpop.f32.mrf.mxu0
  %v3240 = vadd.f32 0.0, %v3239
  %v3241 = vpop.f32.mrf.mxu0
  %3242 = vmatprep.mubr.bf16.mxu0 0
  %3243 = vmatmul.mubr.bf16.gmra.mxu0 %v2907
  %v3244 = vpop.f32.mrf.mxu0
  %v3245 = vadd.f32 0.0, %v3244
  %v3246 = vpop.f32.mrf.mxu0
  %v3247 = vpop.f32.mrf.mxu0
  %v3248 = vadd.f32 0.0, %v3247
  %v3249 = vpop.f32.mrf.mxu0
  %3250 = vmatprep.mubr.bf16.mxu0 0
  %3251 = vmatmul.mubr.bf16.gmra.mxu0 %v2910
  %v3252 = vpop.f32.mrf.mxu0
  %v3253 = vpop.f32.mrf.mxu0
  %v3254 = vpop.f32.mrf.mxu0
  %v3255 = vpop.f32.mrf.mxu0
  %3256 = vmatprep.mubr.bf16.mxu0 0
  %3257 = vmatmul.mubr.bf16.gmra.mxu0 %v2913
  %v3258 = vpop.f32.mrf.mxu0
  %v3259 = vpop.f32.mrf.mxu0
  %v3260 = vpop.f32.mrf.mxu0
  %v3261 = vpop.f32.mrf.mxu0
  %3262 = vmatprep.mubr.bf16.mxu0 0
  %3263 = vmatmul.mubr.bf16.gmra.mxu0 %v2916
  %v3264 = vpop.f32.mrf.mxu0
  %v3265 = vadd.f32 0.0, %v3264
  %v3266 = vpop.f32.mrf.mxu0
  %v3267 = vpop.f32.mrf.mxu0
  %v3268 = vadd.f32 0.0, %v3267
  %v3269 = vpop.f32.mrf.mxu0
  %3270 = vmatprep.mubr.bf16.mxu0 0
  %3271 = vmatmul.mubr.bf16.gmra.mxu0 %v2919
  %v3272 = vpop.f32.mrf.mxu0
  %v3273 = vadd.f32 0.0, %v3272
  %v3274 = vpop.f32.mrf.mxu0
  %v3275 = vpop.f32.mrf.mxu0
  %v3276 = vadd.f32 0.0, %v3275
  %v3277 = vpop.f32.mrf.mxu0
  %3278 = vmatprep.mubr.bf16.mxu0 0
  %3279 = vmatmul.mubr.bf16.gmra.mxu0 %v2922
  %v3280 = vpop.f32.mrf.mxu0
  %v3281 = vadd.f32 0.0, %v3280
  %v3282 = vpop.f32.mrf.mxu0
  %v3283 = vpop.f32.mrf.mxu0
  %v3284 = vadd.f32 0.0, %v3283
  %v3285 = vpop.f32.mrf.mxu0
  %3286 = vmatprep.mubr.bf16.mxu0 0
  %3287 = vmatmul.mubr.bf16.gmra.mxu0 %v2925
  %v3288 = vpop.f32.mrf.mxu0
  %v3289 = vadd.f32 0.0, %v3288
  %v3290 = vpop.f32.mrf.mxu0
  %v3291 = vpop.f32.mrf.mxu0
  %v3292 = vadd.f32 0.0, %v3291
  %v3293 = vpop.f32.mrf.mxu0
  %3294 = vmatprep.mubr.bf16.mxu0 0
  %3295 = vmatmul.mubr.bf16.gmra.mxu0 %v2928
  %v3296 = vpop.f32.mrf.mxu0
  %v3297 = vadd.f32 0.0, %v3296
  %v3298 = vpop.f32.mrf.mxu0
  %v3299 = vpop.f32.mrf.mxu0
  %v3300 = vadd.f32 0.0, %v3299
  %v3301 = vpop.f32.mrf.mxu0
  %3302 = vmatprep.mubr.bf16.mxu0 0
  %3303 = vmatmul.mubr.bf16.gmra.mxu0 %v2931
  %v3304 = vpop.f32.mrf.mxu0
  %v3305 = vadd.f32 0.0, %v3304
  %v3306 = vpop.f32.mrf.mxu0
  %v3307 = vpop.f32.mrf.mxu0
  %v3308 = vadd.f32 0.0, %v3307
  %v3309 = vpop.f32.mrf.mxu0
  %3310 = vmatprep.mubr.bf16.mxu0 0
  %3311 = vmatmul.mubr.bf16.gmra.mxu0 %v2934
  %v3312 = vpop.f32.mrf.mxu0
  %v3313 = vadd.f32 0.0, %v3312
  %v3314 = vpop.f32.mrf.mxu0
  %v3315 = vpop.f32.mrf.mxu0
  %v3316 = vadd.f32 0.0, %v3315
  %v3317 = vpop.f32.mrf.mxu0
  %3318 = vmatprep.mubr.bf16.mxu0 0
  %3319 = vmatmul.mubr.bf16.gmra.mxu0 %v2937
  %v3320 = vpop.f32.mrf.mxu0
  %v3321 = vpop.f32.mrf.mxu0
  %v3322 = vpop.f32.mrf.mxu0
  %v3323 = vpop.f32.mrf.mxu0
  %3324 = vmatprep.mubr.bf16.mxu0 0
  %3325 = vmatmul.mubr.bf16.gmra.mxu0 %v2940
  %v3326 = vpop.f32.mrf.mxu0
  %v3327 = vpop.f32.mrf.mxu0
  %v3328 = vpop.f32.mrf.mxu0
  %v3329 = vpop.f32.mrf.mxu0
  %3330 = vmatprep.mubr.bf16.mxu0 0
  %3331 = vmatmul.mubr.bf16.gmra.mxu0 %v2943
  %v3332 = vpop.f32.mrf.mxu0
  %v3333 = vadd.f32 0.0, %v3332
  %v3334 = vpop.f32.mrf.mxu0
  %v3335 = vpop.f32.mrf.mxu0
  %v3336 = vadd.f32 0.0, %v3335
  %v3337 = vpop.f32.mrf.mxu0
  %3338 = vmatprep.mubr.bf16.mxu0 0
  %3339 = vmatmul.mubr.bf16.gmra.mxu0 %v2946
  %v3340 = vpop.f32.mrf.mxu0
  %v3341 = vadd.f32 0.0, %v3340
  %v3342 = vpop.f32.mrf.mxu0
  %v3343 = vpop.f32.mrf.mxu0
  %v3344 = vadd.f32 0.0, %v3343
  %v3345 = vpop.f32.mrf.mxu0
  %3346 = vmatprep.mubr.bf16.mxu0 0
  %3347 = vmatmul.mubr.bf16.gmra.mxu0 %v2949
  %v3348 = vpop.f32.mrf.mxu0
  %v3349 = vadd.f32 0.0, %v3348
  %v3350 = vpop.f32.mrf.mxu0
  %v3351 = vpop.f32.mrf.mxu0
  %v3352 = vadd.f32 0.0, %v3351
  %v3353 = vpop.f32.mrf.mxu0
  %3354 = vmatprep.mubr.bf16.mxu0 0
  %3355 = vmatmul.mubr.bf16.gmra.mxu0 %v2952
  %v3356 = vpop.f32.mrf.mxu0
  %v3357 = vadd.f32 0.0, %v3356
  %v3358 = vpop.f32.mrf.mxu0
  %v3359 = vpop.f32.mrf.mxu0
  %v3360 = vadd.f32 0.0, %v3359
  %v3361 = vpop.f32.mrf.mxu0
  %3362 = vmatprep.mubr.bf16.mxu0 0
  %3363 = vmatmul.mubr.bf16.gmra.mxu0 %v2955
  %v3364 = vpop.f32.mrf.mxu0
  %v3365 = vadd.f32 0.0, %v3364
  %v3366 = vpop.f32.mrf.mxu0
  %v3367 = vpop.f32.mrf.mxu0
  %v3368 = vadd.f32 0.0, %v3367
  %v3369 = vpop.f32.mrf.mxu0
  %3370 = vmatprep.mubr.bf16.mxu0 0
  %3371 = vmatmul.mubr.bf16.gmra.mxu0 %v2958
  %v3372 = vpop.f32.mrf.mxu0
  %v3373 = vadd.f32 0.0, %v3372
  %v3374 = vpop.f32.mrf.mxu0
  %v3375 = vpop.f32.mrf.mxu0
  %v3376 = vadd.f32 0.0, %v3375
  %v3377 = vpop.f32.mrf.mxu0
  %3378 = vmatprep.mubr.bf16.mxu0 0
  %3379 = vmatmul.mubr.bf16.gmra.mxu0 %v2961
  %v3380 = vpop.f32.mrf.mxu0
  %v3381 = vadd.f32 0.0, %v3380
  %v3382 = vpop.f32.mrf.mxu0
  %v3383 = vpop.f32.mrf.mxu0
  %v3384 = vadd.f32 0.0, %v3383
  %v3385 = vpop.f32.mrf.mxu0
  %3386 = vmatprep.mubr.bf16.mxu0 0
  %3387 = vmatmul.mubr.bf16.gmra.mxu0 %v2964
  %v3388 = vpop.f32.mrf.mxu0
  %v3389 = vpop.f32.mrf.mxu0
  %v3390 = vpop.f32.mrf.mxu0
  %v3391 = vpop.f32.mrf.mxu0
  %3392 = vmatprep.mubr.bf16.mxu0 0
  %3393 = vmatmul.mubr.bf16.gmra.mxu0 %v2967
  %v3394 = vpop.f32.mrf.mxu0
  %v3395 = vpop.f32.mrf.mxu0
  %v3396 = vpop.f32.mrf.mxu0
  %v3397 = vpop.f32.mrf.mxu0
  %3398 = vmatprep.mubr.bf16.mxu0 0
  %3399 = vmatmul.mubr.bf16.gmra.mxu0 %v2970
  %v3400 = vpop.f32.mrf.mxu0
  %v3401 = vadd.f32 0.0, %v3400
  %v3402 = vpop.f32.mrf.mxu0
  %v3403 = vpop.f32.mrf.mxu0
  %v3404 = vadd.f32 0.0, %v3403
  %v3405 = vpop.f32.mrf.mxu0
  %3406 = vmatprep.mubr.bf16.mxu0 0
  %3407 = vmatmul.mubr.bf16.gmra.mxu0 %v2973
  %v3408 = vpop.f32.mrf.mxu0
  %v3409 = vadd.f32 0.0, %v3408
  %v3410 = vpop.f32.mrf.mxu0
  %v3411 = vpop.f32.mrf.mxu0
  %v3412 = vadd.f32 0.0, %v3411
  %v3413 = vpop.f32.mrf.mxu0
  %3414 = vmatprep.mubr.bf16.mxu0 0
  %3415 = vmatmul.mubr.bf16.gmra.mxu0 %v2976
  %v3416 = vpop.f32.mrf.mxu0
  %v3417 = vadd.f32 0.0, %v3416
  %v3418 = vpop.f32.mrf.mxu0
  %v3419 = vpop.f32.mrf.mxu0
  %v3420 = vadd.f32 0.0, %v3419
  %v3421 = vpop.f32.mrf.mxu0
  %3422 = vmatprep.mubr.bf16.mxu0 0
  %3423 = vmatmul.mubr.bf16.gmra.mxu0 %v2979
  %v3424 = vpop.f32.mrf.mxu0
  %v3425 = vadd.f32 0.0, %v3424
  %v3426 = vpop.f32.mrf.mxu0
  %v3427 = vpop.f32.mrf.mxu0
  %v3428 = vadd.f32 0.0, %v3427
  %v3429 = vpop.f32.mrf.mxu0
  %3430 = vmatprep.mubr.bf16.mxu0 0
  %3431 = vmatmul.mubr.bf16.gmra.mxu0 %v2982
  %v3432 = vpop.f32.mrf.mxu0
  %v3433 = vadd.f32 0.0, %v3432
  %v3434 = vpop.f32.mrf.mxu0
  %v3435 = vpop.f32.mrf.mxu0
  %v3436 = vadd.f32 0.0, %v3435
  %v3437 = vpop.f32.mrf.mxu0
  %3438 = vmatprep.mubr.bf16.mxu0 0
  %3439 = vmatmul.mubr.bf16.gmra.mxu0 %v2985
  %v3440 = vpop.f32.mrf.mxu0
  %v3441 = vadd.f32 0.0, %v3440
  %v3442 = vpop.f32.mrf.mxu0
  %v3443 = vpop.f32.mrf.mxu0
  %v3444 = vadd.f32 0.0, %v3443
  %v3445 = vpop.f32.mrf.mxu0
  %3446 = vmatprep.mubr.bf16.mxu0 0
  %3447 = vmatmul.mubr.bf16.gmra.mxu0 %v2988
  %v3448 = vpop.f32.mrf.mxu0
  %v3449 = vadd.f32 0.0, %v3448
  %v3450 = vpop.f32.mrf.mxu0
  %v3451 = vpop.f32.mrf.mxu0
  %v3452 = vadd.f32 0.0, %v3451
  %v3453 = vpop.f32.mrf.mxu0
  %3454 = vmatprep.mubr.bf16.mxu0 0
  %3455 = vmatmul.mubr.bf16.gmra.mxu0 %v2991
  %v3456 = vpop.f32.mrf.mxu0
  %v3457 = vpop.f32.mrf.mxu0
  %v3458 = vpop.f32.mrf.mxu0
  %v3459 = vpop.f32.mrf.mxu0
  %3460 = vmatprep.mubr.bf16.mxu0 0
  %3461 = vmatmul.mubr.bf16.gmra.mxu0 %v2994
  %v3462 = vpop.f32.mrf.mxu0
  %v3463 = vpop.f32.mrf.mxu0
  %v3464 = vpop.f32.mrf.mxu0
  %v3465 = vpop.f32.mrf.mxu0
  %3466 = vmatprep.mubr.bf16.mxu0 0
  %3467 = vmatmul.mubr.bf16.gmra.mxu0 %v2997
  %v3468 = vpop.f32.mrf.mxu0
  %v3469 = vadd.f32 0.0, %v3468
  %v3470 = vpop.f32.mrf.mxu0
  %v3471 = vpop.f32.mrf.mxu0
  %v3472 = vadd.f32 0.0, %v3471
  %v3473 = vpop.f32.mrf.mxu0
  %3474 = vmatprep.mubr.bf16.mxu0 0
  %3475 = vmatmul.mubr.bf16.gmra.mxu0 %v3000
  %v3476 = vpop.f32.mrf.mxu0
  %v3477 = vadd.f32 0.0, %v3476
  %v3478 = vpop.f32.mrf.mxu0
  %v3479 = vpop.f32.mrf.mxu0
  %v3480 = vadd.f32 0.0, %v3479
  %v3481 = vpop.f32.mrf.mxu0
  %3482 = vmatprep.mubr.bf16.mxu0 0
  %3483 = vmatmul.mubr.bf16.gmra.mxu0 %v3003
  %v3484 = vpop.f32.mrf.mxu0
  %v3485 = vadd.f32 0.0, %v3484
  %v3486 = vpop.f32.mrf.mxu0
  %v3487 = vpop.f32.mrf.mxu0
  %v3488 = vadd.f32 0.0, %v3487
  %v3489 = vpop.f32.mrf.mxu0
  %3490 = vmatprep.mubr.bf16.mxu0 0
  %3491 = vmatmul.mubr.bf16.gmra.mxu0 %v3006
  %v3492 = vpop.f32.mrf.mxu0
  %v3493 = vadd.f32 0.0, %v3492
  %v3494 = vpop.f32.mrf.mxu0
  %v3495 = vpop.f32.mrf.mxu0
  %v3496 = vadd.f32 0.0, %v3495
  %v3497 = vpop.f32.mrf.mxu0
  %3498 = vmatprep.mubr.bf16.mxu0 0
  %3499 = vmatmul.mubr.bf16.gmra.mxu0 %v3009
  %v3500 = vpop.f32.mrf.mxu0
  %v3501 = vadd.f32 0.0, %v3500
  %v3502 = vpop.f32.mrf.mxu0
  %v3503 = vpop.f32.mrf.mxu0
  %v3504 = vadd.f32 0.0, %v3503
  %v3505 = vpop.f32.mrf.mxu0
  %3506 = vmatprep.mubr.bf16.mxu0 0
  %3507 = vmatmul.mubr.bf16.gmra.mxu0 %v3012
  %v3508 = vpop.f32.mrf.mxu0
  %v3509 = vadd.f32 0.0, %v3508
  %v3510 = vpop.f32.mrf.mxu0
  %v3511 = vpop.f32.mrf.mxu0
  %v3512 = vadd.f32 0.0, %v3511
  %v3513 = vpop.f32.mrf.mxu0
  %3514 = vmatprep.mubr.bf16.mxu0 0
  %3515 = vmatmul.mubr.bf16.gmra.mxu0 %v3015
  %v3516 = vpop.f32.mrf.mxu0
  %v3517 = vadd.f32 0.0, %v3516
  %v3518 = vpop.f32.mrf.mxu0
  %v3519 = vpop.f32.mrf.mxu0
  %v3520 = vadd.f32 0.0, %v3519
  %v3521 = vpop.f32.mrf.mxu0
  %3522 = vmatprep.mubr.bf16.mxu0 0
  %3523 = vmatmul.mubr.bf16.gmra.mxu0 %v3018
  %v3524 = vpop.f32.mrf.mxu0
  %v3525 = vpop.f32.mrf.mxu0
  %v3526 = vpop.f32.mrf.mxu0
  %v3527 = vpop.f32.mrf.mxu0
  %3528 = vmatprep.mubr.bf16.mxu0 0
  %3529 = vmatmul.mubr.bf16.gmra.mxu0 %v3021
  %v3530 = vpop.f32.mrf.mxu0
  %v3531 = vpop.f32.mrf.mxu0
  %v3532 = vpop.f32.mrf.mxu0
  %v3533 = vpop.f32.mrf.mxu0
  %3534 = vmatprep.mubr.bf16.mxu0 0
  %3535 = vmatmul.mubr.bf16.gmra.mxu0 %v3024
  %v3536 = vpop.f32.mrf.mxu0
  %v3537 = vpop.f32.mrf.mxu0
  %v3538 = vpop.f32.mrf.mxu0
  %v3539 = vpop.f32.mrf.mxu0
  %3540 = vdwg.mxu0
  %v3541 = vadd.f32 %v1888, %v3061
  %v3542 = vadd.f32 %v1891, %v3064
  %v3543 = vadd.f32 %v1896, %v3069
  %v3544 = vadd.f32 %v1899, %v3072
  %v3545 = vadd.f32 %v1904, %v3077
  %v3546 = vadd.f32 %v1907, %v3080
  %v3547 = vadd.f32 %v1912, %v3085
  %v3548 = vadd.f32 %v1915, %v3088
  %v3549 = vadd.f32 %v1920, %v3093
  %v3550 = vadd.f32 %v1923, %v3096
  %v3551 = vadd.f32 %v1928, %v3101
  %v3552 = vadd.f32 %v1931, %v3104
  %v3553 = vadd.f32 %v1936, %v3109
  %v3554 = vadd.f32 %v1939, %v3112
  %v3555 = vadd.f32 %v1956, %v3129
  %v3556 = vadd.f32 %v1959, %v3132
  %v3557 = vadd.f32 %v1964, %v3137
  %v3558 = vadd.f32 %v1967, %v3140
  %v3559 = vadd.f32 %v1972, %v3145
  %v3560 = vadd.f32 %v1975, %v3148
  %v3561 = vadd.f32 %v1980, %v3153
  %v3562 = vadd.f32 %v1983, %v3156
  %v3563 = vadd.f32 %v1988, %v3161
  %v3564 = vadd.f32 %v1991, %v3164
  %v3565 = vadd.f32 %v1996, %v3169
  %v3566 = vadd.f32 %v1999, %v3172
  %v3567 = vadd.f32 %v2004, %v3177
  %v3568 = vadd.f32 %v2007, %v3180
  %v3569 = vadd.f32 %v2024, %v3197
  %v3570 = vadd.f32 %v2027, %v3200
  %v3571 = vadd.f32 %v2032, %v3205
  %v3572 = vadd.f32 %v2035, %v3208
  %v3573 = vadd.f32 %v2040, %v3213
  %v3574 = vadd.f32 %v2043, %v3216
  %v3575 = vadd.f32 %v2048, %v3221
  %v3576 = vadd.f32 %v2051, %v3224
  %v3577 = vadd.f32 %v2056, %v3229
  %v3578 = vadd.f32 %v2059, %v3232
  %v3579 = vadd.f32 %v2064, %v3237
  %v3580 = vadd.f32 %v2067, %v3240
  %v3581 = vadd.f32 %v2072, %v3245
  %v3582 = vadd.f32 %v2075, %v3248
  %v3583 = vadd.f32 %v2092, %v3265
  %v3584 = vadd.f32 %v2095, %v3268
  %v3585 = vadd.f32 %v2100, %v3273
  %v3586 = vadd.f32 %v2103, %v3276
  %v3587 = vadd.f32 %v2108, %v3281
  %v3588 = vadd.f32 %v2111, %v3284
  %v3589 = vadd.f32 %v2116, %v3289
  %v3590 = vadd.f32 %v2119, %v3292
  %v3591 = vadd.f32 %v2124, %v3297
  %v3592 = vadd.f32 %v2127, %v3300
  %v3593 = vadd.f32 %v2132, %v3305
  %v3594 = vadd.f32 %v2135, %v3308
  %v3595 = vadd.f32 %v2140, %v3313
  %v3596 = vadd.f32 %v2143, %v3316
  %v3597 = vadd.f32 %v2160, %v3333
  %v3598 = vadd.f32 %v2163, %v3336
  %v3599 = vadd.f32 %v2168, %v3341
  %v3600 = vadd.f32 %v2171, %v3344
  %v3601 = vadd.f32 %v2176, %v3349
  %v3602 = vadd.f32 %v2179, %v3352
  %v3603 = vadd.f32 %v2184, %v3357
  %v3604 = vadd.f32 %v2187, %v3360
  %v3605 = vadd.f32 %v2192, %v3365
  %v3606 = vadd.f32 %v2195, %v3368
  %v3607 = vadd.f32 %v2200, %v3373
  %v3608 = vadd.f32 %v2203, %v3376
  %v3609 = vadd.f32 %v2208, %v3381
  %v3610 = vadd.f32 %v2211, %v3384
  %v3611 = vadd.f32 %v2228, %v3401
  %v3612 = vadd.f32 %v2231, %v3404
  %v3613 = vadd.f32 %v2236, %v3409
  %v3614 = vadd.f32 %v2239, %v3412
  %v3615 = vadd.f32 %v2244, %v3417
  %v3616 = vadd.f32 %v2247, %v3420
  %v3617 = vadd.f32 %v2252, %v3425
  %v3618 = vadd.f32 %v2255, %v3428
  %v3619 = vadd.f32 %v2260, %v3433
  %v3620 = vadd.f32 %v2263, %v3436
  %v3621 = vadd.f32 %v2268, %v3441
  %v3622 = vadd.f32 %v2271, %v3444
  %v3623 = vadd.f32 %v2276, %v3449
  %v3624 = vadd.f32 %v2279, %v3452
  %v3625 = vadd.f32 %v2296, %v3469
  %v3626 = vadd.f32 %v2299, %v3472
  %v3627 = vadd.f32 %v2304, %v3477
  %v3628 = vadd.f32 %v2307, %v3480
  %v3629 = vadd.f32 %v2312, %v3485
  %v3630 = vadd.f32 %v2315, %v3488
  %v3631 = vadd.f32 %v2320, %v3493
  %v3632 = vadd.f32 %v2323, %v3496
  %v3633 = vadd.f32 %v2328, %v3501
  %v3634 = vadd.f32 %v2331, %v3504
  %v3635 = vadd.f32 %v2336, %v3509
  %v3636 = vadd.f32 %v2339, %v3512
  %v3637 = vadd.f32 %v2344, %v3517
  %v3638 = vadd.f32 %v2347, %v3520
  %s3639 = scalar_lea.vmem %s0, 72
  %v3640 = vld [vmem:[%s3639] sm:$0xf]
  %v3641 = vld [vmem:[%s3639 + $0x4] sm:$0xf]
  %v3642 = vld [vmem:[%s3639 + $0x8] sm:$0xf]
  %v3643 = vld [vmem:[%s3639 + $0xc] sm:$0xf]
  %v3644 = vld [vmem:[%s3639 + $0x10] sm:$0xf]
  %v3645 = vld [vmem:[%s3639 + $0x14] sm:$0xf]
  %v3646 = vld [vmem:[%s3639 + $0x18] sm:$0xf]
  %v3647 = vld [vmem:[%s3639 + $0x1c] sm:$0xf]
  %v3648 = vld [vmem:[%s3639 + $0x20] sm:$0xf]
  %v3649 = vld [vmem:[%s3639 + $0x24] sm:$0xf]
  %v3650 = vld [vmem:[%s3639 + $0x28] sm:$0xf]
  %v3651 = vld [vmem:[%s3639 + $0x2c] sm:$0xf]
  %v3652 = vld [vmem:[%s3639 + $0x30] sm:$0xf]
  %v3653 = vld [vmem:[%s3639 + $0x34] sm:$0xf]
  %v3654 = vld [vmem:[%s3639 + $0x38] sm:$0xf]
  %v3655 = vld [vmem:[%s3639 + $0x3c] sm:$0xf]
  %v3656 = vld [vmem:[%s3639 + $0x40] sm:$0xf]
  %v3657 = vld [vmem:[%s3639 + $0x44] sm:$0xf]
  %v3658 = vld [vmem:[%s3639 + $0x48] sm:$0xf]
  %v3659 = vld [vmem:[%s3639 + $0x4c] sm:$0xf]
  %v3660 = vld [vmem:[%s3639 + $0x50] sm:$0xf]
  %v3661 = vld [vmem:[%s3639 + $0x54] sm:$0xf]
  %v3662 = vld [vmem:[%s3639 + $0x58] sm:$0xf]
  %v3663 = vld [vmem:[%s3639 + $0x5c] sm:$0xf]
  %v3664 = vld [vmem:[%s3639 + $0x60] sm:$0xf]
  %v3665 = vld [vmem:[%s3639 + $0x64] sm:$0xf]
  %v3666 = vld [vmem:[%s3639 + $0x68] sm:$0xf]
  %v3667 = vld [vmem:[%s3639 + $0x6c] sm:$0xf]
  %v3668 = vld [vmem:[%s3639 + $0x70] sm:$0xf]
  %v3669 = vld [vmem:[%s3639 + $0x74] sm:$0xf]
  %v3670 = vld [vmem:[%s3639 + $0x78] sm:$0xf]
  %v3671 = vld [vmem:[%s3639 + $0x7c] sm:$0xf]
  %v3672 = vld [vmem:[%s3639 + $0x80] sm:$0xf]
  %v3673 = vld [vmem:[%s3639 + $0x84] sm:$0xf]
  %v3674 = vld [vmem:[%s3639 + $0x88] sm:$0xf]
  %v3675 = vld [vmem:[%s3639 + $0x8c] sm:$0xf]
  %v3676 = vld [vmem:[%s3639 + $0x90] sm:$0xf]
  %v3677 = vld [vmem:[%s3639 + $0x94] sm:$0xf]
  %v3678 = vld [vmem:[%s3639 + $0x98] sm:$0xf]
  %v3679 = vld [vmem:[%s3639 + $0x9c] sm:$0xf]
  %v3680 = vld [vmem:[%s3639 + $0xa0] sm:$0xf]
  %v3681 = vld [vmem:[%s3639 + $0xa4] sm:$0xf]
  %v3682 = vld [vmem:[%s3639 + $0xa8] sm:$0xf]
  %v3683 = vld [vmem:[%s3639 + $0xac] sm:$0xf]
  %v3684 = vld [vmem:[%s3639 + $0xb0] sm:$0xf]
  %v3685 = vld [vmem:[%s3639 + $0xb4] sm:$0xf]
  %v3686 = vld [vmem:[%s3639 + $0xb8] sm:$0xf]
  %v3687 = vld [vmem:[%s3639 + $0xbc] sm:$0xf]
  %v3688 = vld [vmem:[%s3639 + $0xc0] sm:$0xf]
  %v3689 = vld [vmem:[%s3639 + $0xc4] sm:$0xf]
  %v3690 = vld [vmem:[%s3639 + $0xc8] sm:$0xf]
  %v3691 = vld [vmem:[%s3639 + $0xcc] sm:$0xf]
  %v3692 = vld [vmem:[%s3639 + $0xd0] sm:$0xf]
  %v3693 = vld [vmem:[%s3639 + $0xd4] sm:$0xf]
  %v3694 = vld [vmem:[%s3639 + $0xd8] sm:$0xf]
  %v3695 = vld [vmem:[%s3639 + $0xdc] sm:$0xf]
  %v3696 = vld [vmem:[%s3639 + $0xe0] sm:$0xf]
  %v3697 = vld [vmem:[%s3639 + $0xe4] sm:$0xf]
  %v3698 = vld [vmem:[%s3639 + $0xe8] sm:$0xf]
  %v3699 = vld [vmem:[%s3639 + $0xec] sm:$0xf]
  %v3700 = vld [vmem:[%s3639 + $0xf0] sm:$0xf]
  %v3701 = vld [vmem:[%s3639 + $0xf4] sm:$0xf]
  %v3702 = vld [vmem:[%s3639 + $0xf8] sm:$0xf]
  %v3703 = vld [vmem:[%s3639 + $0xfc] sm:$0xf]
  %v3704 = vld [vmem:[%s3639 + $0x100] sm:$0xf]
  %v3705 = vld [vmem:[%s3639 + $0x104] sm:$0xf]
  %v3706 = vld [vmem:[%s3639 + $0x108] sm:$0xf]
  %v3707 = vld [vmem:[%s3639 + $0x10c] sm:$0xf]
  %v3708 = vld [vmem:[%s3639 + $0x110] sm:$0xf]
  %v3709 = vld [vmem:[%s3639 + $0x114] sm:$0xf]
  %v3710 = vld [vmem:[%s3639 + $0x118] sm:$0xf]
  %v3711 = vld [vmem:[%s3639 + $0x11c] sm:$0xf]
  %v3712 = vld [vmem:[%s3639 + $0x120] sm:$0xf]
  %v3713 = vld [vmem:[%s3639 + $0x124] sm:$0xf]
  %v3714 = vld [vmem:[%s3639 + $0x128] sm:$0xf]
  %v3715 = vld [vmem:[%s3639 + $0x12c] sm:$0xf]
  %v3716 = vld [vmem:[%s3639 + $0x130] sm:$0xf]
  %v3717 = vld [vmem:[%s3639 + $0x134] sm:$0xf]
  %v3718 = vld [vmem:[%s3639 + $0x138] sm:$0xf]
  %v3719 = vld [vmem:[%s3639 + $0x13c] sm:$0xf]
  %v3720 = vld [vmem:[%s3639 + $0x140] sm:$0xf]
  %v3721 = vld [vmem:[%s3639 + $0x144] sm:$0xf]
  %v3722 = vld [vmem:[%s3639 + $0x148] sm:$0xf]
  %v3723 = vld [vmem:[%s3639 + $0x14c] sm:$0xf]
  %v3724 = vld [vmem:[%s3639 + $0x150] sm:$0xf]
  %v3725 = vld [vmem:[%s3639 + $0x154] sm:$0xf]
  %v3726 = vld [vmem:[%s3639 + $0x158] sm:$0xf]
  %v3727 = vld [vmem:[%s3639 + $0x15c] sm:$0xf]
  %v3728 = vld [vmem:[%s3639 + $0x160] sm:$0xf]
  %v3729 = vld [vmem:[%s3639 + $0x164] sm:$0xf]
  %v3730 = vld [vmem:[%s3639 + $0x168] sm:$0xf]
  %v3731 = vld [vmem:[%s3639 + $0x16c] sm:$0xf]
  %v3732 = vld [vmem:[%s3639 + $0x170] sm:$0xf]
  %v3733 = vld [vmem:[%s3639 + $0x174] sm:$0xf]
  %v3734 = vld [vmem:[%s3639 + $0x178] sm:$0xf]
  %v3735 = vld [vmem:[%s3639 + $0x17c] sm:$0xf]
  %v3736 = vld [vmem:[%s3639 + $0x180] sm:$0xf]
  %v3737 = vld [vmem:[%s3639 + $0x184] sm:$0xf]
  %v3738 = vld [vmem:[%s3639 + $0x188] sm:$0xf]
  %v3739 = vld [vmem:[%s3639 + $0x18c] sm:$0xf]
  %v3740 = vld [vmem:[%s3639 + $0x190] sm:$0xf]
  %v3741 = vld [vmem:[%s3639 + $0x194] sm:$0xf]
  %v3742 = vld [vmem:[%s3639 + $0x198] sm:$0xf]
  %v3743 = vld [vmem:[%s3639 + $0x19c] sm:$0xf]
  %v3744 = vld [vmem:[%s3639 + $0x1a0] sm:$0xf]
  %v3745 = vld [vmem:[%s3639 + $0x1a4] sm:$0xf]
  %v3746 = vld [vmem:[%s3639 + $0x1a8] sm:$0xf]
  %v3747 = vld [vmem:[%s3639 + $0x1ac] sm:$0xf]
  %v3748 = vld [vmem:[%s3639 + $0x1b0] sm:$0xf]
  %v3749 = vld [vmem:[%s3639 + $0x1b4] sm:$0xf]
  %v3750 = vld [vmem:[%s3639 + $0x1b8] sm:$0xf]
  %v3751 = vld [vmem:[%s3639 + $0x1bc] sm:$0xf]
  %v3752 = vld [vmem:[%s3639 + $0x1c0] sm:$0xf]
  %v3753 = vld [vmem:[%s3639 + $0x1c4] sm:$0xf]
  %v3754 = vld [vmem:[%s3639 + $0x1c8] sm:$0xf]
  %v3755 = vld [vmem:[%s3639 + $0x1cc] sm:$0xf]
  %v3756 = vld [vmem:[%s3639 + $0x1d0] sm:$0xf]
  %v3757 = vld [vmem:[%s3639 + $0x1d4] sm:$0xf]
  %v3758 = vld [vmem:[%s3639 + $0x1d8] sm:$0xf]
  %v3759 = vld [vmem:[%s3639 + $0x1dc] sm:$0xf]
  %v3760 = vld [vmem:[%s3639 + $0x1e0] sm:$0xf]
  %v3761 = vld [vmem:[%s3639 + $0x1e4] sm:$0xf]
  %v3762 = vld [vmem:[%s3639 + $0x1e8] sm:$0xf]
  %v3763 = vld [vmem:[%s3639 + $0x1ec] sm:$0xf]
  %v3764 = vld [vmem:[%s3639 + $0x1f0] sm:$0xf]
  %v3765 = vld [vmem:[%s3639 + $0x1f4] sm:$0xf]
  %v3766 = vld [vmem:[%s3639 + $0x1f8] sm:$0xf]
  %v3767 = vld [vmem:[%s3639 + $0x1fc] sm:$0xf]
  %s3768 = scalar_lea.vmem %s1, 48
  %v3769 = vld [vmem:[%s3768] sm:$0xf]
  %v3770 = vld [vmem:[%s3768 + $0x4] sm:$0xf]
  %v3771 = vld [vmem:[%s3768 + $0x8] sm:$0xf]
  %v3772 = vld [vmem:[%s3768 + $0xc] sm:$0xf]
  %v3901 = vunpack.c.l.b16 %v3640
  %v3902 = vunpack.c.l.b16 %v3641
  %v3903 = vunpack.c.l.b16 %v3642
  %v3904 = vunpack.c.l.b16 %v3643
  %v3905 = vunpack.c.l.b16 %v3644
  %v3906 = vunpack.c.l.b16 %v3645
  %v3907 = vunpack.c.l.b16 %v3646
  %v3908 = vunpack.c.l.b16 %v3647
  %v3909 = vunpack.c.l.b16 %v3648
  %v3910 = vunpack.c.l.b16 %v3649
  %v3911 = vunpack.c.l.b16 %v3650
  %v3912 = vunpack.c.l.b16 %v3651
  %v3913 = vunpack.c.l.b16 %v3652
  %v3914 = vunpack.c.l.b16 %v3653
  %v3915 = vunpack.c.l.b16 %v3654
  %v3916 = vunpack.c.l.b16 %v3655
  %v3917 = vunpack.c.l.b16 %v3656
  %v3918 = vunpack.c.l.b16 %v3657
  %v3919 = vunpack.c.l.b16 %v3658
  %v3920 = vunpack.c.l.b16 %v3659
  %v3921 = vunpack.c.l.b16 %v3660
  %v3922 = vunpack.c.l.b16 %v3661
  %v3923 = vunpack.c.l.b16 %v3662
  %v3924 = vunpack.c.l.b16 %v3663
  %v3925 = vunpack.c.l.b16 %v3664
  %v3926 = vunpack.c.l.b16 %v3665
  %v3927 = vunpack.c.l.b16 %v3666
  %v3928 = vunpack.c.l.b16 %v3667
  %v3929 = vunpack.c.l.b16 %v3668
  %v3930 = vunpack.c.l.b16 %v3669
  %v3931 = vunpack.c.l.b16 %v3670
  %v3932 = vunpack.c.l.b16 %v3671
  %v3933 = vunpack.c.l.b16 %v3672
  %v3934 = vunpack.c.l.b16 %v3673
  %v3935 = vunpack.c.l.b16 %v3674
  %v3936 = vunpack.c.l.b16 %v3675
  %v3937 = vunpack.c.l.b16 %v3676
  %v3938 = vunpack.c.l.b16 %v3677
  %v3939 = vunpack.c.l.b16 %v3678
  %v3940 = vunpack.c.l.b16 %v3679
  %v3941 = vunpack.c.l.b16 %v3680
  %v3942 = vunpack.c.l.b16 %v3681
  %v3943 = vunpack.c.l.b16 %v3682
  %v3944 = vunpack.c.l.b16 %v3683
  %v3945 = vunpack.c.l.b16 %v3684
  %v3946 = vunpack.c.l.b16 %v3685
  %v3947 = vunpack.c.l.b16 %v3686
  %v3948 = vunpack.c.l.b16 %v3687
  %v3949 = vunpack.c.l.b16 %v3688
  %v3950 = vunpack.c.l.b16 %v3689
  %v3951 = vunpack.c.l.b16 %v3690
  %v3952 = vunpack.c.l.b16 %v3691
  %v3953 = vunpack.c.l.b16 %v3692
  %v3954 = vunpack.c.l.b16 %v3693
  %v3955 = vunpack.c.l.b16 %v3694
  %v3956 = vunpack.c.l.b16 %v3695
  %v3957 = vunpack.c.l.b16 %v3696
  %v3958 = vunpack.c.l.b16 %v3697
  %v3959 = vunpack.c.l.b16 %v3698
  %v3960 = vunpack.c.l.b16 %v3699
  %v3961 = vunpack.c.l.b16 %v3700
  %v3962 = vunpack.c.l.b16 %v3701
  %v3963 = vunpack.c.l.b16 %v3702
  %v3964 = vunpack.c.l.b16 %v3703
  %v3965 = vunpack.c.l.b16 %v3704
  %v3966 = vunpack.c.l.b16 %v3705
  %v3967 = vunpack.c.l.b16 %v3706
  %v3968 = vunpack.c.l.b16 %v3707
  %v3969 = vunpack.c.l.b16 %v3708
  %v3970 = vunpack.c.l.b16 %v3709
  %v3971 = vunpack.c.l.b16 %v3710
  %v3972 = vunpack.c.l.b16 %v3711
  %v3973 = vunpack.c.l.b16 %v3712
  %v3974 = vunpack.c.l.b16 %v3713
  %v3975 = vunpack.c.l.b16 %v3714
  %v3976 = vunpack.c.l.b16 %v3715
  %v3977 = vunpack.c.l.b16 %v3716
  %v3978 = vunpack.c.l.b16 %v3717
  %v3979 = vunpack.c.l.b16 %v3718
  %v3980 = vunpack.c.l.b16 %v3719
  %v3981 = vunpack.c.l.b16 %v3720
  %v3982 = vunpack.c.l.b16 %v3721
  %v3983 = vunpack.c.l.b16 %v3722
  %v3984 = vunpack.c.l.b16 %v3723
  %v3985 = vunpack.c.l.b16 %v3724
  %v3986 = vunpack.c.l.b16 %v3725
  %v3987 = vunpack.c.l.b16 %v3726
  %v3988 = vunpack.c.l.b16 %v3727
  %v3989 = vunpack.c.l.b16 %v3728
  %v3990 = vunpack.c.l.b16 %v3729
  %v3991 = vunpack.c.l.b16 %v3730
  %v3992 = vunpack.c.l.b16 %v3731
  %v3993 = vunpack.c.l.b16 %v3732
  %v3994 = vunpack.c.l.b16 %v3733
  %v3995 = vunpack.c.l.b16 %v3734
  %v3996 = vunpack.c.l.b16 %v3735
  %v3997 = vunpack.c.l.b16 %v3736
  %v3998 = vunpack.c.l.b16 %v3737
  %v3999 = vunpack.c.l.b16 %v3738
  %v4000 = vunpack.c.l.b16 %v3739
  %v4001 = vunpack.c.l.b16 %v3740
  %v4002 = vunpack.c.l.b16 %v3741
  %v4003 = vunpack.c.l.b16 %v3742
  %v4004 = vunpack.c.l.b16 %v3743
  %v4005 = vunpack.c.l.b16 %v3744
  %v4006 = vunpack.c.l.b16 %v3745
  %v4007 = vunpack.c.l.b16 %v3746
  %v4008 = vunpack.c.l.b16 %v3747
  %v4009 = vunpack.c.l.b16 %v3748
  %v4010 = vunpack.c.l.b16 %v3749
  %v4011 = vunpack.c.l.b16 %v3750
  %v4012 = vunpack.c.l.b16 %v3751
  %v4013 = vunpack.c.l.b16 %v3752
  %v4014 = vunpack.c.l.b16 %v3753
  %v4015 = vunpack.c.l.b16 %v3754
  %v4016 = vunpack.c.l.b16 %v3755
  %v4017 = vunpack.c.l.b16 %v3756
  %v4018 = vunpack.c.l.b16 %v3757
  %v4019 = vunpack.c.l.b16 %v3758
  %v4020 = vunpack.c.l.b16 %v3759
  %v4021 = vunpack.c.l.b16 %v3760
  %v4022 = vunpack.c.l.b16 %v3761
  %v4023 = vunpack.c.l.b16 %v3762
  %v4024 = vunpack.c.l.b16 %v3763
  %v4025 = vunpack.c.l.b16 %v3764
  %v4026 = vunpack.c.l.b16 %v3765
  %v4027 = vunpack.c.l.b16 %v3766
  %v4028 = vunpack.c.l.b16 %v3767
  %v4029 = vpack.c.b16 %v3902, %v3901
  %v4030 = vpack.c.b16 %v3904, %v3903
  %v4031 = vpack.c.b16 %v3906, %v3905
  %v4032 = vpack.c.b16 %v3908, %v3907
  %v4033 = vpack.c.b16 %v3910, %v3909
  %v4034 = vpack.c.b16 %v3912, %v3911
  %v4035 = vpack.c.b16 %v3914, %v3913
  %v4036 = vpack.c.b16 %v3916, %v3915
  %v4037 = vpack.c.b16 %v3918, %v3917
  %v4038 = vpack.c.b16 %v3920, %v3919
  %v4039 = vpack.c.b16 %v3922, %v3921
  %v4040 = vpack.c.b16 %v3924, %v3923
  %v4041 = vpack.c.b16 %v3926, %v3925
  %v4042 = vpack.c.b16 %v3928, %v3927
  %v4043 = vpack.c.b16 %v3930, %v3929
  %v4044 = vpack.c.b16 %v3932, %v3931
  %v4045 = vpack.c.b16 %v3934, %v3933
  %v4046 = vpack.c.b16 %v3936, %v3935
  %v4047 = vpack.c.b16 %v3938, %v3937
  %v4048 = vpack.c.b16 %v3940, %v3939
  %v4049 = vpack.c.b16 %v3942, %v3941
  %v4050 = vpack.c.b16 %v3944, %v3943
  %v4051 = vpack.c.b16 %v3946, %v3945
  %v4052 = vpack.c.b16 %v3948, %v3947
  %v4053 = vpack.c.b16 %v3950, %v3949
  %v4054 = vpack.c.b16 %v3952, %v3951
  %v4055 = vpack.c.b16 %v3954, %v3953
  %v4056 = vpack.c.b16 %v3956, %v3955
  %v4057 = vpack.c.b16 %v3958, %v3957
  %v4058 = vpack.c.b16 %v3960, %v3959
  %v4059 = vpack.c.b16 %v3962, %v3961
  %v4060 = vpack.c.b16 %v3964, %v3963
  %v4061 = vpack.c.b16 %v3966, %v3965
  %v4062 = vpack.c.b16 %v3968, %v3967
  %v4063 = vpack.c.b16 %v3970, %v3969
  %v4064 = vpack.c.b16 %v3972, %v3971
  %v4065 = vpack.c.b16 %v3974, %v3973
  %v4066 = vpack.c.b16 %v3976, %v3975
  %v4067 = vpack.c.b16 %v3978, %v3977
  %v4068 = vpack.c.b16 %v3980, %v3979
  %v4069 = vpack.c.b16 %v3982, %v3981
  %v4070 = vpack.c.b16 %v3984, %v3983
  %v4071 = vpack.c.b16 %v3986, %v3985
  %v4072 = vpack.c.b16 %v3988, %v3987
  %v4073 = vpack.c.b16 %v3990, %v3989
  %v4074 = vpack.c.b16 %v3992, %v3991
  %v4075 = vpack.c.b16 %v3994, %v3993
  %v4076 = vpack.c.b16 %v3996, %v3995
  %v4077 = vpack.c.b16 %v3998, %v3997
  %v4078 = vpack.c.b16 %v4000, %v3999
  %v4079 = vpack.c.b16 %v4002, %v4001
  %v4080 = vpack.c.b16 %v4004, %v4003
  %v4081 = vpack.c.b16 %v4006, %v4005
  %v4082 = vpack.c.b16 %v4008, %v4007
  %v4083 = vpack.c.b16 %v4010, %v4009
  %v4084 = vpack.c.b16 %v4012, %v4011
  %v4085 = vpack.c.b16 %v4014, %v4013
  %v4086 = vpack.c.b16 %v4016, %v4015
  %v4087 = vpack.c.b16 %v4018, %v4017
  %v4088 = vpack.c.b16 %v4020, %v4019
  %v4089 = vpack.c.b16 %v4022, %v4021
  %v4090 = vpack.c.b16 %v4024, %v4023
  %v4091 = vpack.c.b16 %v4026, %v4025
  %v4092 = vpack.c.b16 %v4028, %v4027
  %v4097 = vunpack.c.l.b16 %v3769
  %v4098 = vunpack.c.l.b16 %v3770
  %v4099 = vunpack.c.l.b16 %v3771
  %v4100 = vunpack.c.l.b16 %v3772
  %v4101 = vpack.c.b16 %v4098, %v4097
  %v4102 = vpack.c.b16 %v4100, %v4099
  %v4106 = vsel %vm621, %v4029, 0
  %v4109 = vsel %vm621, %v4030, 0
  %v4112 = vsel %vm621, %v4031, 0
  %v4115 = vsel %vm621, %v4032, 0
  %v4118 = vsel %vm621, %v4033, 0
  %v4121 = vsel %vm621, %v4034, 0
  %v4124 = vsel %vm621, %v4035, 0
  %v4127 = vsel %vm621, %v4036, 0
  %v4130 = vsel %vm621, %v4037, 0
  %v4133 = vsel %vm621, %v4038, 0
  %v4136 = vsel %vm621, %v4039, 0
  %v4139 = vsel %vm621, %v4040, 0
  %v4142 = vsel %vm621, %v4041, 0
  %v4145 = vsel %vm621, %v4042, 0
  %v4148 = vsel %vm621, %v4043, 0
  %v4151 = vsel %vm621, %v4044, 0
  %v4154 = vsel %vm621, %v4045, 0
  %v4157 = vsel %vm621, %v4046, 0
  %v4160 = vsel %vm621, %v4047, 0
  %v4163 = vsel %vm621, %v4048, 0
  %v4166 = vsel %vm621, %v4049, 0
  %v4169 = vsel %vm621, %v4050, 0
  %v4172 = vsel %vm621, %v4051, 0
  %v4175 = vsel %vm621, %v4052, 0
  %v4178 = vsel %vm621, %v4053, 0
  %v4181 = vsel %vm621, %v4054, 0
  %v4184 = vsel %vm621, %v4055, 0
  %v4187 = vsel %vm621, %v4056, 0
  %v4190 = vsel %vm621, %v4057, 0
  %v4193 = vsel %vm621, %v4058, 0
  %v4196 = vsel %vm621, %v4059, 0
  %v4199 = vsel %vm621, %v4060, 0
  %v4202 = vsel %vm621, %v4061, 0
  %v4205 = vsel %vm621, %v4062, 0
  %v4208 = vsel %vm621, %v4063, 0
  %v4211 = vsel %vm621, %v4064, 0
  %v4214 = vsel %vm621, %v4065, 0
  %v4217 = vsel %vm621, %v4066, 0
  %v4220 = vsel %vm621, %v4067, 0
  %v4223 = vsel %vm621, %v4068, 0
  %v4226 = vsel %vm621, %v4069, 0
  %v4229 = vsel %vm621, %v4070, 0
  %v4232 = vsel %vm621, %v4071, 0
  %v4235 = vsel %vm621, %v4072, 0
  %v4238 = vsel %vm621, %v4073, 0
  %v4241 = vsel %vm621, %v4074, 0
  %v4244 = vsel %vm621, %v4075, 0
  %v4247 = vsel %vm621, %v4076, 0
  %v4250 = vsel %vm621, %v4077, 0
  %v4253 = vsel %vm621, %v4078, 0
  %v4256 = vsel %vm621, %v4079, 0
  %v4259 = vsel %vm621, %v4080, 0
  %v4262 = vsel %vm621, %v4081, 0
  %v4265 = vsel %vm621, %v4082, 0
  %v4268 = vsel %vm621, %v4083, 0
  %v4271 = vsel %vm621, %v4084, 0
  %v4274 = vsel %vm621, %v4085, 0
  %v4277 = vsel %vm621, %v4086, 0
  %v4280 = vsel %vm621, %v4087, 0
  %v4283 = vsel %vm621, %v4088, 0
  %v4286 = vsel %vm621, %v4089, 0
  %v4289 = vsel %vm621, %v4090, 0
  %v4292 = vsel %vm621, %v4091, 0
  %v4295 = vsel %vm621, %v4092, 0
  %4297 = vmatprep.subr.bf16.mxu0 0
  %4298 = vmatpush1.bf16.msra.mxu0 0
  %4299 = vmatprep.subr.bf16.mxu0 0
  %4300 = vmatpush1.bf16.msra.mxu0 0
  %4301 = vmatprep.subr.bf16.mxu0 0
  %4302 = vmatpush1.bf16.msra.mxu0 0
  %4303 = vmatprep.subr.bf16.mxu0 0
  %4304 = vmatpush1.bf16.msra.mxu0 0
  %4305 = vmatprep.subr.bf16.mxu0 0
  %4306 = vmatpush1.bf16.msra.mxu0 0
  %4307 = vmatprep.subr.bf16.mxu0 0
  %4308 = vmatpush1.bf16.msra.mxu0 0
  %4309 = vmatprep.subr.bf16.mxu0 0
  %4310 = vmatpush1.bf16.msra.mxu0 %v4102
  %4311 = vmatprep.subr.bf16.mxu0 0
  %4312 = vmatpush1.bf16.msra.mxu0 %v4101
  %4313 = vmatprep.subr.bf16.mxu0 0
  %4314 = vmatpush2.bf16.msra.mxu0 0
  %4315 = vmatprep.subr.bf16.mxu0 0
  %4316 = vmatpush2.bf16.msra.mxu0 0
  %4317 = vmatprep.subr.bf16.mxu0 0
  %4318 = vmatpush2.bf16.msra.mxu0 0
  %4319 = vmatprep.subr.bf16.mxu0 0
  %4320 = vmatpush2.bf16.msra.mxu0 0
  %4321 = vmatprep.subr.bf16.mxu0 0
  %4322 = vmatpush2.bf16.msra.mxu0 0
  %4323 = vmatprep.subr.bf16.mxu0 0
  %4324 = vmatpush2.bf16.msra.mxu0 0
  %4325 = vmatprep.subr.bf16.mxu0 0
  %4326 = vmatpush2.bf16.msra.mxu0 0
  %4327 = vmatprep.subr.bf16.mxu0 0
  %4328 = vmatpush2.bf16.msra.mxu0 0
  %4329 = vmatprep.mubr.bf16.mxu0 0
  %4330 = vmatmul.mubr.bf16.gmra.mxu0 %v4106
  %v4331 = vpop.f32.mrf.mxu0
  %v4332 = vadd.f32 0.0, %v4331
  %v4333 = vpop.f32.mrf.mxu0
  %v4334 = vpop.f32.mrf.mxu0
  %v4335 = vadd.f32 0.0, %v4334
  %v4336 = vpop.f32.mrf.mxu0
  %4337 = vmatprep.mubr.bf16.mxu0 0
  %4338 = vmatmul.mubr.bf16.gmra.mxu0 %v4109
  %v4339 = vpop.f32.mrf.mxu0
  %v4340 = vadd.f32 0.0, %v4339
  %v4341 = vpop.f32.mrf.mxu0
  %v4342 = vpop.f32.mrf.mxu0
  %v4343 = vadd.f32 0.0, %v4342
  %v4344 = vpop.f32.mrf.mxu0
  %4345 = vmatprep.mubr.bf16.mxu0 0
  %4346 = vmatmul.mubr.bf16.gmra.mxu0 %v4112
  %v4347 = vpop.f32.mrf.mxu0
  %v4348 = vadd.f32 0.0, %v4347
  %v4349 = vpop.f32.mrf.mxu0
  %v4350 = vpop.f32.mrf.mxu0
  %v4351 = vadd.f32 0.0, %v4350
  %v4352 = vpop.f32.mrf.mxu0
  %4353 = vmatprep.mubr.bf16.mxu0 0
  %4354 = vmatmul.mubr.bf16.gmra.mxu0 %v4115
  %v4355 = vpop.f32.mrf.mxu0
  %v4356 = vadd.f32 0.0, %v4355
  %v4357 = vpop.f32.mrf.mxu0
  %v4358 = vpop.f32.mrf.mxu0
  %v4359 = vadd.f32 0.0, %v4358
  %v4360 = vpop.f32.mrf.mxu0
  %4361 = vmatprep.mubr.bf16.mxu0 0
  %4362 = vmatmul.mubr.bf16.gmra.mxu0 %v4118
  %v4363 = vpop.f32.mrf.mxu0
  %v4364 = vadd.f32 0.0, %v4363
  %v4365 = vpop.f32.mrf.mxu0
  %v4366 = vpop.f32.mrf.mxu0
  %v4367 = vadd.f32 0.0, %v4366
  %v4368 = vpop.f32.mrf.mxu0
  %4369 = vmatprep.mubr.bf16.mxu0 0
  %4370 = vmatmul.mubr.bf16.gmra.mxu0 %v4121
  %v4371 = vpop.f32.mrf.mxu0
  %v4372 = vadd.f32 0.0, %v4371
  %v4373 = vpop.f32.mrf.mxu0
  %v4374 = vpop.f32.mrf.mxu0
  %v4375 = vadd.f32 0.0, %v4374
  %v4376 = vpop.f32.mrf.mxu0
  %4377 = vmatprep.mubr.bf16.mxu0 0
  %4378 = vmatmul.mubr.bf16.gmra.mxu0 %v4124
  %v4379 = vpop.f32.mrf.mxu0
  %v4380 = vadd.f32 0.0, %v4379
  %v4381 = vpop.f32.mrf.mxu0
  %v4382 = vpop.f32.mrf.mxu0
  %v4383 = vadd.f32 0.0, %v4382
  %v4384 = vpop.f32.mrf.mxu0
  %4385 = vmatprep.mubr.bf16.mxu0 0
  %4386 = vmatmul.mubr.bf16.gmra.mxu0 %v4127
  %v4387 = vpop.f32.mrf.mxu0
  %v4388 = vpop.f32.mrf.mxu0
  %v4389 = vpop.f32.mrf.mxu0
  %v4390 = vpop.f32.mrf.mxu0
  %4391 = vmatprep.mubr.bf16.mxu0 0
  %4392 = vmatmul.mubr.bf16.gmra.mxu0 %v4130
  %v4393 = vpop.f32.mrf.mxu0
  %v4394 = vpop.f32.mrf.mxu0
  %v4395 = vpop.f32.mrf.mxu0
  %v4396 = vpop.f32.mrf.mxu0
  %4397 = vmatprep.mubr.bf16.mxu0 0
  %4398 = vmatmul.mubr.bf16.gmra.mxu0 %v4133
  %v4399 = vpop.f32.mrf.mxu0
  %v4400 = vadd.f32 0.0, %v4399
  %v4401 = vpop.f32.mrf.mxu0
  %v4402 = vpop.f32.mrf.mxu0
  %v4403 = vadd.f32 0.0, %v4402
  %v4404 = vpop.f32.mrf.mxu0
  %4405 = vmatprep.mubr.bf16.mxu0 0
  %4406 = vmatmul.mubr.bf16.gmra.mxu0 %v4136
  %v4407 = vpop.f32.mrf.mxu0
  %v4408 = vadd.f32 0.0, %v4407
  %v4409 = vpop.f32.mrf.mxu0
  %v4410 = vpop.f32.mrf.mxu0
  %v4411 = vadd.f32 0.0, %v4410
  %v4412 = vpop.f32.mrf.mxu0
  %4413 = vmatprep.mubr.bf16.mxu0 0
  %4414 = vmatmul.mubr.bf16.gmra.mxu0 %v4139
  %v4415 = vpop.f32.mrf.mxu0
  %v4416 = vadd.f32 0.0, %v4415
  %v4417 = vpop.f32.mrf.mxu0
  %v4418 = vpop.f32.mrf.mxu0
  %v4419 = vadd.f32 0.0, %v4418
  %v4420 = vpop.f32.mrf.mxu0
  %4421 = vmatprep.mubr.bf16.mxu0 0
  %4422 = vmatmul.mubr.bf16.gmra.mxu0 %v4142
  %v4423 = vpop.f32.mrf.mxu0
  %v4424 = vadd.f32 0.0, %v4423
  %v4425 = vpop.f32.mrf.mxu0
  %v4426 = vpop.f32.mrf.mxu0
  %v4427 = vadd.f32 0.0, %v4426
  %v4428 = vpop.f32.mrf.mxu0
  %4429 = vmatprep.mubr.bf16.mxu0 0
  %4430 = vmatmul.mubr.bf16.gmra.mxu0 %v4145
  %v4431 = vpop.f32.mrf.mxu0
  %v4432 = vadd.f32 0.0, %v4431
  %v4433 = vpop.f32.mrf.mxu0
  %v4434 = vpop.f32.mrf.mxu0
  %v4435 = vadd.f32 0.0, %v4434
  %v4436 = vpop.f32.mrf.mxu0
  %4437 = vmatprep.mubr.bf16.mxu0 0
  %4438 = vmatmul.mubr.bf16.gmra.mxu0 %v4148
  %v4439 = vpop.f32.mrf.mxu0
  %v4440 = vadd.f32 0.0, %v4439
  %v4441 = vpop.f32.mrf.mxu0
  %v4442 = vpop.f32.mrf.mxu0
  %v4443 = vadd.f32 0.0, %v4442
  %v4444 = vpop.f32.mrf.mxu0
  %4445 = vmatprep.mubr.bf16.mxu0 0
  %4446 = vmatmul.mubr.bf16.gmra.mxu0 %v4151
  %v4447 = vpop.f32.mrf.mxu0
  %v4448 = vadd.f32 0.0, %v4447
  %v4449 = vpop.f32.mrf.mxu0
  %v4450 = vpop.f32.mrf.mxu0
  %v4451 = vadd.f32 0.0, %v4450
  %v4452 = vpop.f32.mrf.mxu0
  %4453 = vmatprep.mubr.bf16.mxu0 0
  %4454 = vmatmul.mubr.bf16.gmra.mxu0 %v4154
  %v4455 = vpop.f32.mrf.mxu0
  %v4456 = vpop.f32.mrf.mxu0
  %v4457 = vpop.f32.mrf.mxu0
  %v4458 = vpop.f32.mrf.mxu0
  %4459 = vmatprep.mubr.bf16.mxu0 0
  %4460 = vmatmul.mubr.bf16.gmra.mxu0 %v4157
  %v4461 = vpop.f32.mrf.mxu0
  %v4462 = vpop.f32.mrf.mxu0
  %v4463 = vpop.f32.mrf.mxu0
  %v4464 = vpop.f32.mrf.mxu0
  %4465 = vmatprep.mubr.bf16.mxu0 0
  %4466 = vmatmul.mubr.bf16.gmra.mxu0 %v4160
  %v4467 = vpop.f32.mrf.mxu0
  %v4468 = vadd.f32 0.0, %v4467
  %v4469 = vpop.f32.mrf.mxu0
  %v4470 = vpop.f32.mrf.mxu0
  %v4471 = vadd.f32 0.0, %v4470
  %v4472 = vpop.f32.mrf.mxu0
  %4473 = vmatprep.mubr.bf16.mxu0 0
  %4474 = vmatmul.mubr.bf16.gmra.mxu0 %v4163
  %v4475 = vpop.f32.mrf.mxu0
  %v4476 = vadd.f32 0.0, %v4475
  %v4477 = vpop.f32.mrf.mxu0
  %v4478 = vpop.f32.mrf.mxu0
  %v4479 = vadd.f32 0.0, %v4478
  %v4480 = vpop.f32.mrf.mxu0
  %4481 = vmatprep.mubr.bf16.mxu0 0
  %4482 = vmatmul.mubr.bf16.gmra.mxu0 %v4166
  %v4483 = vpop.f32.mrf.mxu0
  %v4484 = vadd.f32 0.0, %v4483
  %v4485 = vpop.f32.mrf.mxu0
  %v4486 = vpop.f32.mrf.mxu0
  %v4487 = vadd.f32 0.0, %v4486
  %v4488 = vpop.f32.mrf.mxu0
  %4489 = vmatprep.mubr.bf16.mxu0 0
  %4490 = vmatmul.mubr.bf16.gmra.mxu0 %v4169
  %v4491 = vpop.f32.mrf.mxu0
  %v4492 = vadd.f32 0.0, %v4491
  %v4493 = vpop.f32.mrf.mxu0
  %v4494 = vpop.f32.mrf.mxu0
  %v4495 = vadd.f32 0.0, %v4494
  %v4496 = vpop.f32.mrf.mxu0
  %4497 = vmatprep.mubr.bf16.mxu0 0
  %4498 = vmatmul.mubr.bf16.gmra.mxu0 %v4172
  %v4499 = vpop.f32.mrf.mxu0
  %v4500 = vadd.f32 0.0, %v4499
  %v4501 = vpop.f32.mrf.mxu0
  %v4502 = vpop.f32.mrf.mxu0
  %v4503 = vadd.f32 0.0, %v4502
  %v4504 = vpop.f32.mrf.mxu0
  %4505 = vmatprep.mubr.bf16.mxu0 0
  %4506 = vmatmul.mubr.bf16.gmra.mxu0 %v4175
  %v4507 = vpop.f32.mrf.mxu0
  %v4508 = vadd.f32 0.0, %v4507
  %v4509 = vpop.f32.mrf.mxu0
  %v4510 = vpop.f32.mrf.mxu0
  %v4511 = vadd.f32 0.0, %v4510
  %v4512 = vpop.f32.mrf.mxu0
  %4513 = vmatprep.mubr.bf16.mxu0 0
  %4514 = vmatmul.mubr.bf16.gmra.mxu0 %v4178
  %v4515 = vpop.f32.mrf.mxu0
  %v4516 = vadd.f32 0.0, %v4515
  %v4517 = vpop.f32.mrf.mxu0
  %v4518 = vpop.f32.mrf.mxu0
  %v4519 = vadd.f32 0.0, %v4518
  %v4520 = vpop.f32.mrf.mxu0
  %4521 = vmatprep.mubr.bf16.mxu0 0
  %4522 = vmatmul.mubr.bf16.gmra.mxu0 %v4181
  %v4523 = vpop.f32.mrf.mxu0
  %v4524 = vpop.f32.mrf.mxu0
  %v4525 = vpop.f32.mrf.mxu0
  %v4526 = vpop.f32.mrf.mxu0
  %4527 = vmatprep.mubr.bf16.mxu0 0
  %4528 = vmatmul.mubr.bf16.gmra.mxu0 %v4184
  %v4529 = vpop.f32.mrf.mxu0
  %v4530 = vpop.f32.mrf.mxu0
  %v4531 = vpop.f32.mrf.mxu0
  %v4532 = vpop.f32.mrf.mxu0
  %4533 = vmatprep.mubr.bf16.mxu0 0
  %4534 = vmatmul.mubr.bf16.gmra.mxu0 %v4187
  %v4535 = vpop.f32.mrf.mxu0
  %v4536 = vadd.f32 0.0, %v4535
  %v4537 = vpop.f32.mrf.mxu0
  %v4538 = vpop.f32.mrf.mxu0
  %v4539 = vadd.f32 0.0, %v4538
  %v4540 = vpop.f32.mrf.mxu0
  %4541 = vmatprep.mubr.bf16.mxu0 0
  %4542 = vmatmul.mubr.bf16.gmra.mxu0 %v4190
  %v4543 = vpop.f32.mrf.mxu0
  %v4544 = vadd.f32 0.0, %v4543
  %v4545 = vpop.f32.mrf.mxu0
  %v4546 = vpop.f32.mrf.mxu0
  %v4547 = vadd.f32 0.0, %v4546
  %v4548 = vpop.f32.mrf.mxu0
  %4549 = vmatprep.mubr.bf16.mxu0 0
  %4550 = vmatmul.mubr.bf16.gmra.mxu0 %v4193
  %v4551 = vpop.f32.mrf.mxu0
  %v4552 = vadd.f32 0.0, %v4551
  %v4553 = vpop.f32.mrf.mxu0
  %v4554 = vpop.f32.mrf.mxu0
  %v4555 = vadd.f32 0.0, %v4554
  %v4556 = vpop.f32.mrf.mxu0
  %4557 = vmatprep.mubr.bf16.mxu0 0
  %4558 = vmatmul.mubr.bf16.gmra.mxu0 %v4196
  %v4559 = vpop.f32.mrf.mxu0
  %v4560 = vadd.f32 0.0, %v4559
  %v4561 = vpop.f32.mrf.mxu0
  %v4562 = vpop.f32.mrf.mxu0
  %v4563 = vadd.f32 0.0, %v4562
  %v4564 = vpop.f32.mrf.mxu0
  %4565 = vmatprep.mubr.bf16.mxu0 0
  %4566 = vmatmul.mubr.bf16.gmra.mxu0 %v4199
  %v4567 = vpop.f32.mrf.mxu0
  %v4568 = vadd.f32 0.0, %v4567
  %v4569 = vpop.f32.mrf.mxu0
  %v4570 = vpop.f32.mrf.mxu0
  %v4571 = vadd.f32 0.0, %v4570
  %v4572 = vpop.f32.mrf.mxu0
  %4573 = vmatprep.mubr.bf16.mxu0 0
  %4574 = vmatmul.mubr.bf16.gmra.mxu0 %v4202
  %v4575 = vpop.f32.mrf.mxu0
  %v4576 = vadd.f32 0.0, %v4575
  %v4577 = vpop.f32.mrf.mxu0
  %v4578 = vpop.f32.mrf.mxu0
  %v4579 = vadd.f32 0.0, %v4578
  %v4580 = vpop.f32.mrf.mxu0
  %4581 = vmatprep.mubr.bf16.mxu0 0
  %4582 = vmatmul.mubr.bf16.gmra.mxu0 %v4205
  %v4583 = vpop.f32.mrf.mxu0
  %v4584 = vadd.f32 0.0, %v4583
  %v4585 = vpop.f32.mrf.mxu0
  %v4586 = vpop.f32.mrf.mxu0
  %v4587 = vadd.f32 0.0, %v4586
  %v4588 = vpop.f32.mrf.mxu0
  %4589 = vmatprep.mubr.bf16.mxu0 0
  %4590 = vmatmul.mubr.bf16.gmra.mxu0 %v4208
  %v4591 = vpop.f32.mrf.mxu0
  %v4592 = vpop.f32.mrf.mxu0
  %v4593 = vpop.f32.mrf.mxu0
  %v4594 = vpop.f32.mrf.mxu0
  %4595 = vmatprep.mubr.bf16.mxu0 0
  %4596 = vmatmul.mubr.bf16.gmra.mxu0 %v4211
  %v4597 = vpop.f32.mrf.mxu0
  %v4598 = vpop.f32.mrf.mxu0
  %v4599 = vpop.f32.mrf.mxu0
  %v4600 = vpop.f32.mrf.mxu0
  %4601 = vmatprep.mubr.bf16.mxu0 0
  %4602 = vmatmul.mubr.bf16.gmra.mxu0 %v4214
  %v4603 = vpop.f32.mrf.mxu0
  %v4604 = vadd.f32 0.0, %v4603
  %v4605 = vpop.f32.mrf.mxu0
  %v4606 = vpop.f32.mrf.mxu0
  %v4607 = vadd.f32 0.0, %v4606
  %v4608 = vpop.f32.mrf.mxu0
  %4609 = vmatprep.mubr.bf16.mxu0 0
  %4610 = vmatmul.mubr.bf16.gmra.mxu0 %v4217
  %v4611 = vpop.f32.mrf.mxu0
  %v4612 = vadd.f32 0.0, %v4611
  %v4613 = vpop.f32.mrf.mxu0
  %v4614 = vpop.f32.mrf.mxu0
  %v4615 = vadd.f32 0.0, %v4614
  %v4616 = vpop.f32.mrf.mxu0
  %4617 = vmatprep.mubr.bf16.mxu0 0
  %4618 = vmatmul.mubr.bf16.gmra.mxu0 %v4220
  %v4619 = vpop.f32.mrf.mxu0
  %v4620 = vadd.f32 0.0, %v4619
  %v4621 = vpop.f32.mrf.mxu0
  %v4622 = vpop.f32.mrf.mxu0
  %v4623 = vadd.f32 0.0, %v4622
  %v4624 = vpop.f32.mrf.mxu0
  %4625 = vmatprep.mubr.bf16.mxu0 0
  %4626 = vmatmul.mubr.bf16.gmra.mxu0 %v4223
  %v4627 = vpop.f32.mrf.mxu0
  %v4628 = vadd.f32 0.0, %v4627
  %v4629 = vpop.f32.mrf.mxu0
  %v4630 = vpop.f32.mrf.mxu0
  %v4631 = vadd.f32 0.0, %v4630
  %v4632 = vpop.f32.mrf.mxu0
  %4633 = vmatprep.mubr.bf16.mxu0 0
  %4634 = vmatmul.mubr.bf16.gmra.mxu0 %v4226
  %v4635 = vpop.f32.mrf.mxu0
  %v4636 = vadd.f32 0.0, %v4635
  %v4637 = vpop.f32.mrf.mxu0
  %v4638 = vpop.f32.mrf.mxu0
  %v4639 = vadd.f32 0.0, %v4638
  %v4640 = vpop.f32.mrf.mxu0
  %4641 = vmatprep.mubr.bf16.mxu0 0
  %4642 = vmatmul.mubr.bf16.gmra.mxu0 %v4229
  %v4643 = vpop.f32.mrf.mxu0
  %v4644 = vadd.f32 0.0, %v4643
  %v4645 = vpop.f32.mrf.mxu0
  %v4646 = vpop.f32.mrf.mxu0
  %v4647 = vadd.f32 0.0, %v4646
  %v4648 = vpop.f32.mrf.mxu0
  %4649 = vmatprep.mubr.bf16.mxu0 0
  %4650 = vmatmul.mubr.bf16.gmra.mxu0 %v4232
  %v4651 = vpop.f32.mrf.mxu0
  %v4652 = vadd.f32 0.0, %v4651
  %v4653 = vpop.f32.mrf.mxu0
  %v4654 = vpop.f32.mrf.mxu0
  %v4655 = vadd.f32 0.0, %v4654
  %v4656 = vpop.f32.mrf.mxu0
  %4657 = vmatprep.mubr.bf16.mxu0 0
  %4658 = vmatmul.mubr.bf16.gmra.mxu0 %v4235
  %v4659 = vpop.f32.mrf.mxu0
  %v4660 = vpop.f32.mrf.mxu0
  %v4661 = vpop.f32.mrf.mxu0
  %v4662 = vpop.f32.mrf.mxu0
  %4663 = vmatprep.mubr.bf16.mxu0 0
  %4664 = vmatmul.mubr.bf16.gmra.mxu0 %v4238
  %v4665 = vpop.f32.mrf.mxu0
  %v4666 = vpop.f32.mrf.mxu0
  %v4667 = vpop.f32.mrf.mxu0
  %v4668 = vpop.f32.mrf.mxu0
  %4669 = vmatprep.mubr.bf16.mxu0 0
  %4670 = vmatmul.mubr.bf16.gmra.mxu0 %v4241
  %v4671 = vpop.f32.mrf.mxu0
  %v4672 = vadd.f32 0.0, %v4671
  %v4673 = vpop.f32.mrf.mxu0
  %v4674 = vpop.f32.mrf.mxu0
  %v4675 = vadd.f32 0.0, %v4674
  %v4676 = vpop.f32.mrf.mxu0
  %4677 = vmatprep.mubr.bf16.mxu0 0
  %4678 = vmatmul.mubr.bf16.gmra.mxu0 %v4244
  %v4679 = vpop.f32.mrf.mxu0
  %v4680 = vadd.f32 0.0, %v4679
  %v4681 = vpop.f32.mrf.mxu0
  %v4682 = vpop.f32.mrf.mxu0
  %v4683 = vadd.f32 0.0, %v4682
  %v4684 = vpop.f32.mrf.mxu0
  %4685 = vmatprep.mubr.bf16.mxu0 0
  %4686 = vmatmul.mubr.bf16.gmra.mxu0 %v4247
  %v4687 = vpop.f32.mrf.mxu0
  %v4688 = vadd.f32 0.0, %v4687
  %v4689 = vpop.f32.mrf.mxu0
  %v4690 = vpop.f32.mrf.mxu0
  %v4691 = vadd.f32 0.0, %v4690
  %v4692 = vpop.f32.mrf.mxu0
  %4693 = vmatprep.mubr.bf16.mxu0 0
  %4694 = vmatmul.mubr.bf16.gmra.mxu0 %v4250
  %v4695 = vpop.f32.mrf.mxu0
  %v4696 = vadd.f32 0.0, %v4695
  %v4697 = vpop.f32.mrf.mxu0
  %v4698 = vpop.f32.mrf.mxu0
  %v4699 = vadd.f32 0.0, %v4698
  %v4700 = vpop.f32.mrf.mxu0
  %4701 = vmatprep.mubr.bf16.mxu0 0
  %4702 = vmatmul.mubr.bf16.gmra.mxu0 %v4253
  %v4703 = vpop.f32.mrf.mxu0
  %v4704 = vadd.f32 0.0, %v4703
  %v4705 = vpop.f32.mrf.mxu0
  %v4706 = vpop.f32.mrf.mxu0
  %v4707 = vadd.f32 0.0, %v4706
  %v4708 = vpop.f32.mrf.mxu0
  %4709 = vmatprep.mubr.bf16.mxu0 0
  %4710 = vmatmul.mubr.bf16.gmra.mxu0 %v4256
  %v4711 = vpop.f32.mrf.mxu0
  %v4712 = vadd.f32 0.0, %v4711
  %v4713 = vpop.f32.mrf.mxu0
  %v4714 = vpop.f32.mrf.mxu0
  %v4715 = vadd.f32 0.0, %v4714
  %v4716 = vpop.f32.mrf.mxu0
  %4717 = vmatprep.mubr.bf16.mxu0 0
  %4718 = vmatmul.mubr.bf16.gmra.mxu0 %v4259
  %v4719 = vpop.f32.mrf.mxu0
  %v4720 = vadd.f32 0.0, %v4719
  %v4721 = vpop.f32.mrf.mxu0
  %v4722 = vpop.f32.mrf.mxu0
  %v4723 = vadd.f32 0.0, %v4722
  %v4724 = vpop.f32.mrf.mxu0
  %4725 = vmatprep.mubr.bf16.mxu0 0
  %4726 = vmatmul.mubr.bf16.gmra.mxu0 %v4262
  %v4727 = vpop.f32.mrf.mxu0
  %v4728 = vpop.f32.mrf.mxu0
  %v4729 = vpop.f32.mrf.mxu0
  %v4730 = vpop.f32.mrf.mxu0
  %4731 = vmatprep.mubr.bf16.mxu0 0
  %4732 = vmatmul.mubr.bf16.gmra.mxu0 %v4265
  %v4733 = vpop.f32.mrf.mxu0
  %v4734 = vpop.f32.mrf.mxu0
  %v4735 = vpop.f32.mrf.mxu0
  %v4736 = vpop.f32.mrf.mxu0
  %4737 = vmatprep.mubr.bf16.mxu0 0
  %4738 = vmatmul.mubr.bf16.gmra.mxu0 %v4268
  %v4739 = vpop.f32.mrf.mxu0
  %v4740 = vadd.f32 0.0, %v4739
  %v4741 = vpop.f32.mrf.mxu0
  %v4742 = vpop.f32.mrf.mxu0
  %v4743 = vadd.f32 0.0, %v4742
  %v4744 = vpop.f32.mrf.mxu0
  %4745 = vmatprep.mubr.bf16.mxu0 0
  %4746 = vmatmul.mubr.bf16.gmra.mxu0 %v4271
  %v4747 = vpop.f32.mrf.mxu0
  %v4748 = vadd.f32 0.0, %v4747
  %v4749 = vpop.f32.mrf.mxu0
  %v4750 = vpop.f32.mrf.mxu0
  %v4751 = vadd.f32 0.0, %v4750
  %v4752 = vpop.f32.mrf.mxu0
  %4753 = vmatprep.mubr.bf16.mxu0 0
  %4754 = vmatmul.mubr.bf16.gmra.mxu0 %v4274
  %v4755 = vpop.f32.mrf.mxu0
  %v4756 = vadd.f32 0.0, %v4755
  %v4757 = vpop.f32.mrf.mxu0
  %v4758 = vpop.f32.mrf.mxu0
  %v4759 = vadd.f32 0.0, %v4758
  %v4760 = vpop.f32.mrf.mxu0
  %4761 = vmatprep.mubr.bf16.mxu0 0
  %4762 = vmatmul.mubr.bf16.gmra.mxu0 %v4277
  %v4763 = vpop.f32.mrf.mxu0
  %v4764 = vadd.f32 0.0, %v4763
  %v4765 = vpop.f32.mrf.mxu0
  %v4766 = vpop.f32.mrf.mxu0
  %v4767 = vadd.f32 0.0, %v4766
  %v4768 = vpop.f32.mrf.mxu0
  %4769 = vmatprep.mubr.bf16.mxu0 0
  %4770 = vmatmul.mubr.bf16.gmra.mxu0 %v4280
  %v4771 = vpop.f32.mrf.mxu0
  %v4772 = vadd.f32 0.0, %v4771
  %v4773 = vpop.f32.mrf.mxu0
  %v4774 = vpop.f32.mrf.mxu0
  %v4775 = vadd.f32 0.0, %v4774
  %v4776 = vpop.f32.mrf.mxu0
  %4777 = vmatprep.mubr.bf16.mxu0 0
  %4778 = vmatmul.mubr.bf16.gmra.mxu0 %v4283
  %v4779 = vpop.f32.mrf.mxu0
  %v4780 = vadd.f32 0.0, %v4779
  %v4781 = vpop.f32.mrf.mxu0
  %v4782 = vpop.f32.mrf.mxu0
  %v4783 = vadd.f32 0.0, %v4782
  %v4784 = vpop.f32.mrf.mxu0
  %4785 = vmatprep.mubr.bf16.mxu0 0
  %4786 = vmatmul.mubr.bf16.gmra.mxu0 %v4286
  %v4787 = vpop.f32.mrf.mxu0
  %v4788 = vadd.f32 0.0, %v4787
  %v4789 = vpop.f32.mrf.mxu0
  %v4790 = vpop.f32.mrf.mxu0
  %v4791 = vadd.f32 0.0, %v4790
  %v4792 = vpop.f32.mrf.mxu0
  %4793 = vmatprep.mubr.bf16.mxu0 0
  %4794 = vmatmul.mubr.bf16.gmra.mxu0 %v4289
  %v4795 = vpop.f32.mrf.mxu0
  %v4796 = vpop.f32.mrf.mxu0
  %v4797 = vpop.f32.mrf.mxu0
  %v4798 = vpop.f32.mrf.mxu0
  %4799 = vmatprep.mubr.bf16.mxu0 0
  %4800 = vmatmul.mubr.bf16.gmra.mxu0 %v4292
  %v4801 = vpop.f32.mrf.mxu0
  %v4802 = vpop.f32.mrf.mxu0
  %v4803 = vpop.f32.mrf.mxu0
  %v4804 = vpop.f32.mrf.mxu0
  %4805 = vmatprep.mubr.bf16.mxu0 0
  %4806 = vmatmul.mubr.bf16.gmra.mxu0 %v4295
  %v4807 = vpop.f32.mrf.mxu0
  %v4808 = vpop.f32.mrf.mxu0
  %v4809 = vpop.f32.mrf.mxu0
  %v4810 = vpop.f32.mrf.mxu0
  %4811 = vdwg.mxu0
  %v4812 = vadd.f32 %v3541, %v4332
  %v4813 = vadd.f32 %v3542, %v4335
  %v4814 = vadd.f32 %v3543, %v4340
  %v4815 = vadd.f32 %v3544, %v4343
  %v4816 = vadd.f32 %v3545, %v4348
  %v4817 = vadd.f32 %v3546, %v4351
  %v4818 = vadd.f32 %v3547, %v4356
  %v4819 = vadd.f32 %v3548, %v4359
  %v4820 = vadd.f32 %v3549, %v4364
  %v4821 = vadd.f32 %v3550, %v4367
  %v4822 = vadd.f32 %v3551, %v4372
  %v4823 = vadd.f32 %v3552, %v4375
  %v4824 = vadd.f32 %v3553, %v4380
  %v4825 = vadd.f32 %v3554, %v4383
  %v4826 = vadd.f32 %v3555, %v4400
  %v4827 = vadd.f32 %v3556, %v4403
  %v4828 = vadd.f32 %v3557, %v4408
  %v4829 = vadd.f32 %v3558, %v4411
  %v4830 = vadd.f32 %v3559, %v4416
  %v4831 = vadd.f32 %v3560, %v4419
  %v4832 = vadd.f32 %v3561, %v4424
  %v4833 = vadd.f32 %v3562, %v4427
  %v4834 = vadd.f32 %v3563, %v4432
  %v4835 = vadd.f32 %v3564, %v4435
  %v4836 = vadd.f32 %v3565, %v4440
  %v4837 = vadd.f32 %v3566, %v4443
  %v4838 = vadd.f32 %v3567, %v4448
  %v4839 = vadd.f32 %v3568, %v4451
  %v4840 = vadd.f32 %v3569, %v4468
  %v4841 = vadd.f32 %v3570, %v4471
  %v4842 = vadd.f32 %v3571, %v4476
  %v4843 = vadd.f32 %v3572, %v4479
  %v4844 = vadd.f32 %v3573, %v4484
  %v4845 = vadd.f32 %v3574, %v4487
  %v4846 = vadd.f32 %v3575, %v4492
  %v4847 = vadd.f32 %v3576, %v4495
  %v4848 = vadd.f32 %v3577, %v4500
  %v4849 = vadd.f32 %v3578, %v4503
  %v4850 = vadd.f32 %v3579, %v4508
  %v4851 = vadd.f32 %v3580, %v4511
  %v4852 = vadd.f32 %v3581, %v4516
  %v4853 = vadd.f32 %v3582, %v4519
  %v4854 = vadd.f32 %v3583, %v4536
  %v4855 = vadd.f32 %v3584, %v4539
  %v4856 = vadd.f32 %v3585, %v4544
  %v4857 = vadd.f32 %v3586, %v4547
  %v4858 = vadd.f32 %v3587, %v4552
  %v4859 = vadd.f32 %v3588, %v4555
  %v4860 = vadd.f32 %v3589, %v4560
  %v4861 = vadd.f32 %v3590, %v4563
  %v4862 = vadd.f32 %v3591, %v4568
  %v4863 = vadd.f32 %v3592, %v4571
  %v4864 = vadd.f32 %v3593, %v4576
  %v4865 = vadd.f32 %v3594, %v4579
  %v4866 = vadd.f32 %v3595, %v4584
  %v4867 = vadd.f32 %v3596, %v4587
  %v4868 = vadd.f32 %v3597, %v4604
  %v4869 = vadd.f32 %v3598, %v4607
  %v4870 = vadd.f32 %v3599, %v4612
  %v4871 = vadd.f32 %v3600, %v4615
  %v4872 = vadd.f32 %v3601, %v4620
  %v4873 = vadd.f32 %v3602, %v4623
  %v4874 = vadd.f32 %v3603, %v4628
  %v4875 = vadd.f32 %v3604, %v4631
  %v4876 = vadd.f32 %v3605, %v4636
  %v4877 = vadd.f32 %v3606, %v4639
  %v4878 = vadd.f32 %v3607, %v4644
  %v4879 = vadd.f32 %v3608, %v4647
  %v4880 = vadd.f32 %v3609, %v4652
  %v4881 = vadd.f32 %v3610, %v4655
  %v4882 = vadd.f32 %v3611, %v4672
  %v4883 = vadd.f32 %v3612, %v4675
  %v4884 = vadd.f32 %v3613, %v4680
  %v4885 = vadd.f32 %v3614, %v4683
  %v4886 = vadd.f32 %v3615, %v4688
  %v4887 = vadd.f32 %v3616, %v4691
  %v4888 = vadd.f32 %v3617, %v4696
  %v4889 = vadd.f32 %v3618, %v4699
  %v4890 = vadd.f32 %v3619, %v4704
  %v4891 = vadd.f32 %v3620, %v4707
  %v4892 = vadd.f32 %v3621, %v4712
  %v4893 = vadd.f32 %v3622, %v4715
  %v4894 = vadd.f32 %v3623, %v4720
  %v4895 = vadd.f32 %v3624, %v4723
  %v4896 = vadd.f32 %v3625, %v4740
  %v4897 = vadd.f32 %v3626, %v4743
  %v4898 = vadd.f32 %v3627, %v4748
  %v4899 = vadd.f32 %v3628, %v4751
  %v4900 = vadd.f32 %v3629, %v4756
  %v4901 = vadd.f32 %v3630, %v4759
  %v4902 = vadd.f32 %v3631, %v4764
  %v4903 = vadd.f32 %v3632, %v4767
  %v4904 = vadd.f32 %v3633, %v4772
  %v4905 = vadd.f32 %v3634, %v4775
  %v4906 = vadd.f32 %v3635, %v4780
  %v4907 = vadd.f32 %v3636, %v4783
  %v4908 = vadd.f32 %v3637, %v4788
  %v4909 = vadd.f32 %v3638, %v4791
  %s4910 = scalar_lea.vmem %s0, 80
  %v4911 = vld [vmem:[%s4910] sm:$0xf]
  %v4912 = vld [vmem:[%s4910 + $0x4] sm:$0xf]
  %v4913 = vld [vmem:[%s4910 + $0x8] sm:$0xf]
  %v4914 = vld [vmem:[%s4910 + $0xc] sm:$0xf]
  %v4915 = vld [vmem:[%s4910 + $0x10] sm:$0xf]
  %v4916 = vld [vmem:[%s4910 + $0x14] sm:$0xf]
  %v4917 = vld [vmem:[%s4910 + $0x18] sm:$0xf]
  %v4918 = vld [vmem:[%s4910 + $0x1c] sm:$0xf]
  %v4919 = vld [vmem:[%s4910 + $0x20] sm:$0xf]
  %v4920 = vld [vmem:[%s4910 + $0x24] sm:$0xf]
  %v4921 = vld [vmem:[%s4910 + $0x28] sm:$0xf]
  %v4922 = vld [vmem:[%s4910 + $0x2c] sm:$0xf]
  %v4923 = vld [vmem:[%s4910 + $0x30] sm:$0xf]
  %v4924 = vld [vmem:[%s4910 + $0x34] sm:$0xf]
  %v4925 = vld [vmem:[%s4910 + $0x38] sm:$0xf]
  %v4926 = vld [vmem:[%s4910 + $0x3c] sm:$0xf]
  %v4927 = vld [vmem:[%s4910 + $0x40] sm:$0xf]
  %v4928 = vld [vmem:[%s4910 + $0x44] sm:$0xf]
  %v4929 = vld [vmem:[%s4910 + $0x48] sm:$0xf]
  %v4930 = vld [vmem:[%s4910 + $0x4c] sm:$0xf]
  %v4931 = vld [vmem:[%s4910 + $0x50] sm:$0xf]
  %v4932 = vld [vmem:[%s4910 + $0x54] sm:$0xf]
  %v4933 = vld [vmem:[%s4910 + $0x58] sm:$0xf]
  %v4934 = vld [vmem:[%s4910 + $0x5c] sm:$0xf]
  %v4935 = vld [vmem:[%s4910 + $0x60] sm:$0xf]
  %v4936 = vld [vmem:[%s4910 + $0x64] sm:$0xf]
  %v4937 = vld [vmem:[%s4910 + $0x68] sm:$0xf]
  %v4938 = vld [vmem:[%s4910 + $0x6c] sm:$0xf]
  %v4939 = vld [vmem:[%s4910 + $0x70] sm:$0xf]
  %v4940 = vld [vmem:[%s4910 + $0x74] sm:$0xf]
  %v4941 = vld [vmem:[%s4910 + $0x78] sm:$0xf]
  %v4942 = vld [vmem:[%s4910 + $0x7c] sm:$0xf]
  %v4943 = vld [vmem:[%s4910 + $0x80] sm:$0xf]
  %v4944 = vld [vmem:[%s4910 + $0x84] sm:$0xf]
  %v4945 = vld [vmem:[%s4910 + $0x88] sm:$0xf]
  %v4946 = vld [vmem:[%s4910 + $0x8c] sm:$0xf]
  %v4947 = vld [vmem:[%s4910 + $0x90] sm:$0xf]
  %v4948 = vld [vmem:[%s4910 + $0x94] sm:$0xf]
  %v4949 = vld [vmem:[%s4910 + $0x98] sm:$0xf]
  %v4950 = vld [vmem:[%s4910 + $0x9c] sm:$0xf]
  %v4951 = vld [vmem:[%s4910 + $0xa0] sm:$0xf]
  %v4952 = vld [vmem:[%s4910 + $0xa4] sm:$0xf]
  %v4953 = vld [vmem:[%s4910 + $0xa8] sm:$0xf]
  %v4954 = vld [vmem:[%s4910 + $0xac] sm:$0xf]
  %v4955 = vld [vmem:[%s4910 + $0xb0] sm:$0xf]
  %v4956 = vld [vmem:[%s4910 + $0xb4] sm:$0xf]
  %v4957 = vld [vmem:[%s4910 + $0xb8] sm:$0xf]
  %v4958 = vld [vmem:[%s4910 + $0xbc] sm:$0xf]
  %v4959 = vld [vmem:[%s4910 + $0xc0] sm:$0xf]
  %v4960 = vld [vmem:[%s4910 + $0xc4] sm:$0xf]
  %v4961 = vld [vmem:[%s4910 + $0xc8] sm:$0xf]
  %v4962 = vld [vmem:[%s4910 + $0xcc] sm:$0xf]
  %v4963 = vld [vmem:[%s4910 + $0xd0] sm:$0xf]
  %v4964 = vld [vmem:[%s4910 + $0xd4] sm:$0xf]
  %v4965 = vld [vmem:[%s4910 + $0xd8] sm:$0xf]
  %v4966 = vld [vmem:[%s4910 + $0xdc] sm:$0xf]
  %v4967 = vld [vmem:[%s4910 + $0xe0] sm:$0xf]
  %v4968 = vld [vmem:[%s4910 + $0xe4] sm:$0xf]
  %v4969 = vld [vmem:[%s4910 + $0xe8] sm:$0xf]
  %v4970 = vld [vmem:[%s4910 + $0xec] sm:$0xf]
  %v4971 = vld [vmem:[%s4910 + $0xf0] sm:$0xf]
  %v4972 = vld [vmem:[%s4910 + $0xf4] sm:$0xf]
  %v4973 = vld [vmem:[%s4910 + $0xf8] sm:$0xf]
  %v4974 = vld [vmem:[%s4910 + $0xfc] sm:$0xf]
  %v4975 = vld [vmem:[%s4910 + $0x100] sm:$0xf]
  %v4976 = vld [vmem:[%s4910 + $0x104] sm:$0xf]
  %v4977 = vld [vmem:[%s4910 + $0x108] sm:$0xf]
  %v4978 = vld [vmem:[%s4910 + $0x10c] sm:$0xf]
  %v4979 = vld [vmem:[%s4910 + $0x110] sm:$0xf]
  %v4980 = vld [vmem:[%s4910 + $0x114] sm:$0xf]
  %v4981 = vld [vmem:[%s4910 + $0x118] sm:$0xf]
  %v4982 = vld [vmem:[%s4910 + $0x11c] sm:$0xf]
  %v4983 = vld [vmem:[%s4910 + $0x120] sm:$0xf]
  %v4984 = vld [vmem:[%s4910 + $0x124] sm:$0xf]
  %v4985 = vld [vmem:[%s4910 + $0x128] sm:$0xf]
  %v4986 = vld [vmem:[%s4910 + $0x12c] sm:$0xf]
  %v4987 = vld [vmem:[%s4910 + $0x130] sm:$0xf]
  %v4988 = vld [vmem:[%s4910 + $0x134] sm:$0xf]
  %v4989 = vld [vmem:[%s4910 + $0x138] sm:$0xf]
  %v4990 = vld [vmem:[%s4910 + $0x13c] sm:$0xf]
  %v4991 = vld [vmem:[%s4910 + $0x140] sm:$0xf]
  %v4992 = vld [vmem:[%s4910 + $0x144] sm:$0xf]
  %v4993 = vld [vmem:[%s4910 + $0x148] sm:$0xf]
  %v4994 = vld [vmem:[%s4910 + $0x14c] sm:$0xf]
  %v4995 = vld [vmem:[%s4910 + $0x150] sm:$0xf]
  %v4996 = vld [vmem:[%s4910 + $0x154] sm:$0xf]
  %v4997 = vld [vmem:[%s4910 + $0x158] sm:$0xf]
  %v4998 = vld [vmem:[%s4910 + $0x15c] sm:$0xf]
  %v4999 = vld [vmem:[%s4910 + $0x160] sm:$0xf]
  %v5000 = vld [vmem:[%s4910 + $0x164] sm:$0xf]
  %v5001 = vld [vmem:[%s4910 + $0x168] sm:$0xf]
  %v5002 = vld [vmem:[%s4910 + $0x16c] sm:$0xf]
  %v5003 = vld [vmem:[%s4910 + $0x170] sm:$0xf]
  %v5004 = vld [vmem:[%s4910 + $0x174] sm:$0xf]
  %v5005 = vld [vmem:[%s4910 + $0x178] sm:$0xf]
  %v5006 = vld [vmem:[%s4910 + $0x17c] sm:$0xf]
  %v5007 = vld [vmem:[%s4910 + $0x180] sm:$0xf]
  %v5008 = vld [vmem:[%s4910 + $0x184] sm:$0xf]
  %v5009 = vld [vmem:[%s4910 + $0x188] sm:$0xf]
  %v5010 = vld [vmem:[%s4910 + $0x18c] sm:$0xf]
  %v5011 = vld [vmem:[%s4910 + $0x190] sm:$0xf]
  %v5012 = vld [vmem:[%s4910 + $0x194] sm:$0xf]
  %v5013 = vld [vmem:[%s4910 + $0x198] sm:$0xf]
  %v5014 = vld [vmem:[%s4910 + $0x19c] sm:$0xf]
  %v5015 = vld [vmem:[%s4910 + $0x1a0] sm:$0xf]
  %v5016 = vld [vmem:[%s4910 + $0x1a4] sm:$0xf]
  %v5017 = vld [vmem:[%s4910 + $0x1a8] sm:$0xf]
  %v5018 = vld [vmem:[%s4910 + $0x1ac] sm:$0xf]
  %v5019 = vld [vmem:[%s4910 + $0x1b0] sm:$0xf]
  %v5020 = vld [vmem:[%s4910 + $0x1b4] sm:$0xf]
  %v5021 = vld [vmem:[%s4910 + $0x1b8] sm:$0xf]
  %v5022 = vld [vmem:[%s4910 + $0x1bc] sm:$0xf]
  %v5023 = vld [vmem:[%s4910 + $0x1c0] sm:$0xf]
  %v5024 = vld [vmem:[%s4910 + $0x1c4] sm:$0xf]
  %v5025 = vld [vmem:[%s4910 + $0x1c8] sm:$0xf]
  %v5026 = vld [vmem:[%s4910 + $0x1cc] sm:$0xf]
  %v5027 = vld [vmem:[%s4910 + $0x1d0] sm:$0xf]
  %v5028 = vld [vmem:[%s4910 + $0x1d4] sm:$0xf]
  %v5029 = vld [vmem:[%s4910 + $0x1d8] sm:$0xf]
  %v5030 = vld [vmem:[%s4910 + $0x1dc] sm:$0xf]
  %v5031 = vld [vmem:[%s4910 + $0x1e0] sm:$0xf]
  %v5032 = vld [vmem:[%s4910 + $0x1e4] sm:$0xf]
  %v5033 = vld [vmem:[%s4910 + $0x1e8] sm:$0xf]
  %v5034 = vld [vmem:[%s4910 + $0x1ec] sm:$0xf]
  %v5035 = vld [vmem:[%s4910 + $0x1f0] sm:$0xf]
  %v5036 = vld [vmem:[%s4910 + $0x1f4] sm:$0xf]
  %v5037 = vld [vmem:[%s4910 + $0x1f8] sm:$0xf]
  %v5038 = vld [vmem:[%s4910 + $0x1fc] sm:$0xf]
  %s5039 = scalar_lea.vmem %s1, 64
  %v5040 = vld [vmem:[%s5039] sm:$0xf]
  %v5041 = vld [vmem:[%s5039 + $0x4] sm:$0xf]
  %v5042 = vld [vmem:[%s5039 + $0x8] sm:$0xf]
  %v5043 = vld [vmem:[%s5039 + $0xc] sm:$0xf]
  %v5172 = vunpack.c.l.b16 %v4911
  %v5173 = vunpack.c.l.b16 %v4912
  %v5174 = vunpack.c.l.b16 %v4913
  %v5175 = vunpack.c.l.b16 %v4914
  %v5176 = vunpack.c.l.b16 %v4915
  %v5177 = vunpack.c.l.b16 %v4916
  %v5178 = vunpack.c.l.b16 %v4917
  %v5179 = vunpack.c.l.b16 %v4918
  %v5180 = vunpack.c.l.b16 %v4919
  %v5181 = vunpack.c.l.b16 %v4920
  %v5182 = vunpack.c.l.b16 %v4921
  %v5183 = vunpack.c.l.b16 %v4922
  %v5184 = vunpack.c.l.b16 %v4923
  %v5185 = vunpack.c.l.b16 %v4924
  %v5186 = vunpack.c.l.b16 %v4925
  %v5187 = vunpack.c.l.b16 %v4926
  %v5188 = vunpack.c.l.b16 %v4927
  %v5189 = vunpack.c.l.b16 %v4928
  %v5190 = vunpack.c.l.b16 %v4929
  %v5191 = vunpack.c.l.b16 %v4930
  %v5192 = vunpack.c.l.b16 %v4931
  %v5193 = vunpack.c.l.b16 %v4932
  %v5194 = vunpack.c.l.b16 %v4933
  %v5195 = vunpack.c.l.b16 %v4934
  %v5196 = vunpack.c.l.b16 %v4935
  %v5197 = vunpack.c.l.b16 %v4936
  %v5198 = vunpack.c.l.b16 %v4937
  %v5199 = vunpack.c.l.b16 %v4938
  %v5200 = vunpack.c.l.b16 %v4939
  %v5201 = vunpack.c.l.b16 %v4940
  %v5202 = vunpack.c.l.b16 %v4941
  %v5203 = vunpack.c.l.b16 %v4942
  %v5204 = vunpack.c.l.b16 %v4943
  %v5205 = vunpack.c.l.b16 %v4944
  %v5206 = vunpack.c.l.b16 %v4945
  %v5207 = vunpack.c.l.b16 %v4946
  %v5208 = vunpack.c.l.b16 %v4947
  %v5209 = vunpack.c.l.b16 %v4948
  %v5210 = vunpack.c.l.b16 %v4949
  %v5211 = vunpack.c.l.b16 %v4950
  %v5212 = vunpack.c.l.b16 %v4951
  %v5213 = vunpack.c.l.b16 %v4952
  %v5214 = vunpack.c.l.b16 %v4953
  %v5215 = vunpack.c.l.b16 %v4954
  %v5216 = vunpack.c.l.b16 %v4955
  %v5217 = vunpack.c.l.b16 %v4956
  %v5218 = vunpack.c.l.b16 %v4957
  %v5219 = vunpack.c.l.b16 %v4958
  %v5220 = vunpack.c.l.b16 %v4959
  %v5221 = vunpack.c.l.b16 %v4960
  %v5222 = vunpack.c.l.b16 %v4961
  %v5223 = vunpack.c.l.b16 %v4962
  %v5224 = vunpack.c.l.b16 %v4963
  %v5225 = vunpack.c.l.b16 %v4964
  %v5226 = vunpack.c.l.b16 %v4965
  %v5227 = vunpack.c.l.b16 %v4966
  %v5228 = vunpack.c.l.b16 %v4967
  %v5229 = vunpack.c.l.b16 %v4968
  %v5230 = vunpack.c.l.b16 %v4969
  %v5231 = vunpack.c.l.b16 %v4970
  %v5232 = vunpack.c.l.b16 %v4971
  %v5233 = vunpack.c.l.b16 %v4972
  %v5234 = vunpack.c.l.b16 %v4973
  %v5235 = vunpack.c.l.b16 %v4974
  %v5236 = vunpack.c.l.b16 %v4975
  %v5237 = vunpack.c.l.b16 %v4976
  %v5238 = vunpack.c.l.b16 %v4977
  %v5239 = vunpack.c.l.b16 %v4978
  %v5240 = vunpack.c.l.b16 %v4979
  %v5241 = vunpack.c.l.b16 %v4980
  %v5242 = vunpack.c.l.b16 %v4981
  %v5243 = vunpack.c.l.b16 %v4982
  %v5244 = vunpack.c.l.b16 %v4983
  %v5245 = vunpack.c.l.b16 %v4984
  %v5246 = vunpack.c.l.b16 %v4985
  %v5247 = vunpack.c.l.b16 %v4986
  %v5248 = vunpack.c.l.b16 %v4987
  %v5249 = vunpack.c.l.b16 %v4988
  %v5250 = vunpack.c.l.b16 %v4989
  %v5251 = vunpack.c.l.b16 %v4990
  %v5252 = vunpack.c.l.b16 %v4991
  %v5253 = vunpack.c.l.b16 %v4992
  %v5254 = vunpack.c.l.b16 %v4993
  %v5255 = vunpack.c.l.b16 %v4994
  %v5256 = vunpack.c.l.b16 %v4995
  %v5257 = vunpack.c.l.b16 %v4996
  %v5258 = vunpack.c.l.b16 %v4997
  %v5259 = vunpack.c.l.b16 %v4998
  %v5260 = vunpack.c.l.b16 %v4999
  %v5261 = vunpack.c.l.b16 %v5000
  %v5262 = vunpack.c.l.b16 %v5001
  %v5263 = vunpack.c.l.b16 %v5002
  %v5264 = vunpack.c.l.b16 %v5003
  %v5265 = vunpack.c.l.b16 %v5004
  %v5266 = vunpack.c.l.b16 %v5005
  %v5267 = vunpack.c.l.b16 %v5006
  %v5268 = vunpack.c.l.b16 %v5007
  %v5269 = vunpack.c.l.b16 %v5008
  %v5270 = vunpack.c.l.b16 %v5009
  %v5271 = vunpack.c.l.b16 %v5010
  %v5272 = vunpack.c.l.b16 %v5011
  %v5273 = vunpack.c.l.b16 %v5012
  %v5274 = vunpack.c.l.b16 %v5013
  %v5275 = vunpack.c.l.b16 %v5014
  %v5276 = vunpack.c.l.b16 %v5015
  %v5277 = vunpack.c.l.b16 %v5016
  %v5278 = vunpack.c.l.b16 %v5017
  %v5279 = vunpack.c.l.b16 %v5018
  %v5280 = vunpack.c.l.b16 %v5019
  %v5281 = vunpack.c.l.b16 %v5020
  %v5282 = vunpack.c.l.b16 %v5021
  %v5283 = vunpack.c.l.b16 %v5022
  %v5284 = vunpack.c.l.b16 %v5023
  %v5285 = vunpack.c.l.b16 %v5024
  %v5286 = vunpack.c.l.b16 %v5025
  %v5287 = vunpack.c.l.b16 %v5026
  %v5288 = vunpack.c.l.b16 %v5027
  %v5289 = vunpack.c.l.b16 %v5028
  %v5290 = vunpack.c.l.b16 %v5029
  %v5291 = vunpack.c.l.b16 %v5030
  %v5292 = vunpack.c.l.b16 %v5031
  %v5293 = vunpack.c.l.b16 %v5032
  %v5294 = vunpack.c.l.b16 %v5033
  %v5295 = vunpack.c.l.b16 %v5034
  %v5296 = vunpack.c.l.b16 %v5035
  %v5297 = vunpack.c.l.b16 %v5036
  %v5298 = vunpack.c.l.b16 %v5037
  %v5299 = vunpack.c.l.b16 %v5038
  %v5300 = vpack.c.b16 %v5173, %v5172
  %v5301 = vpack.c.b16 %v5175, %v5174
  %v5302 = vpack.c.b16 %v5177, %v5176
  %v5303 = vpack.c.b16 %v5179, %v5178
  %v5304 = vpack.c.b16 %v5181, %v5180
  %v5305 = vpack.c.b16 %v5183, %v5182
  %v5306 = vpack.c.b16 %v5185, %v5184
  %v5307 = vpack.c.b16 %v5187, %v5186
  %v5308 = vpack.c.b16 %v5189, %v5188
  %v5309 = vpack.c.b16 %v5191, %v5190
  %v5310 = vpack.c.b16 %v5193, %v5192
  %v5311 = vpack.c.b16 %v5195, %v5194
  %v5312 = vpack.c.b16 %v5197, %v5196
  %v5313 = vpack.c.b16 %v5199, %v5198
  %v5314 = vpack.c.b16 %v5201, %v5200
  %v5315 = vpack.c.b16 %v5203, %v5202
  %v5316 = vpack.c.b16 %v5205, %v5204
  %v5317 = vpack.c.b16 %v5207, %v5206
  %v5318 = vpack.c.b16 %v5209, %v5208
  %v5319 = vpack.c.b16 %v5211, %v5210
  %v5320 = vpack.c.b16 %v5213, %v5212
  %v5321 = vpack.c.b16 %v5215, %v5214
  %v5322 = vpack.c.b16 %v5217, %v5216
  %v5323 = vpack.c.b16 %v5219, %v5218
  %v5324 = vpack.c.b16 %v5221, %v5220
  %v5325 = vpack.c.b16 %v5223, %v5222
  %v5326 = vpack.c.b16 %v5225, %v5224
  %v5327 = vpack.c.b16 %v5227, %v5226
  %v5328 = vpack.c.b16 %v5229, %v5228
  %v5329 = vpack.c.b16 %v5231, %v5230
  %v5330 = vpack.c.b16 %v5233, %v5232
  %v5331 = vpack.c.b16 %v5235, %v5234
  %v5332 = vpack.c.b16 %v5237, %v5236
  %v5333 = vpack.c.b16 %v5239, %v5238
  %v5334 = vpack.c.b16 %v5241, %v5240
  %v5335 = vpack.c.b16 %v5243, %v5242
  %v5336 = vpack.c.b16 %v5245, %v5244
  %v5337 = vpack.c.b16 %v5247, %v5246
  %v5338 = vpack.c.b16 %v5249, %v5248
  %v5339 = vpack.c.b16 %v5251, %v5250
  %v5340 = vpack.c.b16 %v5253, %v5252
  %v5341 = vpack.c.b16 %v5255, %v5254
  %v5342 = vpack.c.b16 %v5257, %v5256
  %v5343 = vpack.c.b16 %v5259, %v5258
  %v5344 = vpack.c.b16 %v5261, %v5260
  %v5345 = vpack.c.b16 %v5263, %v5262
  %v5346 = vpack.c.b16 %v5265, %v5264
  %v5347 = vpack.c.b16 %v5267, %v5266
  %v5348 = vpack.c.b16 %v5269, %v5268
  %v5349 = vpack.c.b16 %v5271, %v5270
  %v5350 = vpack.c.b16 %v5273, %v5272
  %v5351 = vpack.c.b16 %v5275, %v5274
  %v5352 = vpack.c.b16 %v5277, %v5276
  %v5353 = vpack.c.b16 %v5279, %v5278
  %v5354 = vpack.c.b16 %v5281, %v5280
  %v5355 = vpack.c.b16 %v5283, %v5282
  %v5356 = vpack.c.b16 %v5285, %v5284
  %v5357 = vpack.c.b16 %v5287, %v5286
  %v5358 = vpack.c.b16 %v5289, %v5288
  %v5359 = vpack.c.b16 %v5291, %v5290
  %v5360 = vpack.c.b16 %v5293, %v5292
  %v5361 = vpack.c.b16 %v5295, %v5294
  %v5362 = vpack.c.b16 %v5297, %v5296
  %v5363 = vpack.c.b16 %v5299, %v5298
  %v5368 = vunpack.c.l.b16 %v5040
  %v5369 = vunpack.c.l.b16 %v5041
  %v5370 = vunpack.c.l.b16 %v5042
  %v5371 = vunpack.c.l.b16 %v5043
  %v5372 = vpack.c.b16 %v5369, %v5368
  %v5373 = vpack.c.b16 %v5371, %v5370
  %v5377 = vsel %vm621, %v5300, 0
  %v5380 = vsel %vm621, %v5301, 0
  %v5383 = vsel %vm621, %v5302, 0
  %v5386 = vsel %vm621, %v5303, 0
  %v5389 = vsel %vm621, %v5304, 0
  %v5392 = vsel %vm621, %v5305, 0
  %v5395 = vsel %vm621, %v5306, 0
  %v5398 = vsel %vm621, %v5307, 0
  %v5401 = vsel %vm621, %v5308, 0
  %v5404 = vsel %vm621, %v5309, 0
  %v5407 = vsel %vm621, %v5310, 0
  %v5410 = vsel %vm621, %v5311, 0
  %v5413 = vsel %vm621, %v5312, 0
  %v5416 = vsel %vm621, %v5313, 0
  %v5419 = vsel %vm621, %v5314, 0
  %v5422 = vsel %vm621, %v5315, 0
  %v5425 = vsel %vm621, %v5316, 0
  %v5428 = vsel %vm621, %v5317, 0
  %v5431 = vsel %vm621, %v5318, 0
  %v5434 = vsel %vm621, %v5319, 0
  %v5437 = vsel %vm621, %v5320, 0
  %v5440 = vsel %vm621, %v5321, 0
  %v5443 = vsel %vm621, %v5322, 0
  %v5446 = vsel %vm621, %v5323, 0
  %v5449 = vsel %vm621, %v5324, 0
  %v5452 = vsel %vm621, %v5325, 0
  %v5455 = vsel %vm621, %v5326, 0
  %v5458 = vsel %vm621, %v5327, 0
  %v5461 = vsel %vm621, %v5328, 0
  %v5464 = vsel %vm621, %v5329, 0
  %v5467 = vsel %vm621, %v5330, 0
  %v5470 = vsel %vm621, %v5331, 0
  %v5473 = vsel %vm621, %v5332, 0
  %v5476 = vsel %vm621, %v5333, 0
  %v5479 = vsel %vm621, %v5334, 0
  %v5482 = vsel %vm621, %v5335, 0
  %v5485 = vsel %vm621, %v5336, 0
  %v5488 = vsel %vm621, %v5337, 0
  %v5491 = vsel %vm621, %v5338, 0
  %v5494 = vsel %vm621, %v5339, 0
  %v5497 = vsel %vm621, %v5340, 0
  %v5500 = vsel %vm621, %v5341, 0
  %v5503 = vsel %vm621, %v5342, 0
  %v5506 = vsel %vm621, %v5343, 0
  %v5509 = vsel %vm621, %v5344, 0
  %v5512 = vsel %vm621, %v5345, 0
  %v5515 = vsel %vm621, %v5346, 0
  %v5518 = vsel %vm621, %v5347, 0
  %v5521 = vsel %vm621, %v5348, 0
  %v5524 = vsel %vm621, %v5349, 0
  %v5527 = vsel %vm621, %v5350, 0
  %v5530 = vsel %vm621, %v5351, 0
  %v5533 = vsel %vm621, %v5352, 0
  %v5536 = vsel %vm621, %v5353, 0
  %v5539 = vsel %vm621, %v5354, 0
  %v5542 = vsel %vm621, %v5355, 0
  %v5545 = vsel %vm621, %v5356, 0
  %v5548 = vsel %vm621, %v5357, 0
  %v5551 = vsel %vm621, %v5358, 0
  %v5554 = vsel %vm621, %v5359, 0
  %v5557 = vsel %vm621, %v5360, 0
  %v5560 = vsel %vm621, %v5361, 0
  %v5563 = vsel %vm621, %v5362, 0
  %v5566 = vsel %vm621, %v5363, 0
  %5568 = vmatprep.subr.bf16.mxu0 0
  %5569 = vmatpush1.bf16.msra.mxu0 0
  %5570 = vmatprep.subr.bf16.mxu0 0
  %5571 = vmatpush1.bf16.msra.mxu0 0
  %5572 = vmatprep.subr.bf16.mxu0 0
  %5573 = vmatpush1.bf16.msra.mxu0 0
  %5574 = vmatprep.subr.bf16.mxu0 0
  %5575 = vmatpush1.bf16.msra.mxu0 0
  %5576 = vmatprep.subr.bf16.mxu0 0
  %5577 = vmatpush1.bf16.msra.mxu0 0
  %5578 = vmatprep.subr.bf16.mxu0 0
  %5579 = vmatpush1.bf16.msra.mxu0 0
  %5580 = vmatprep.subr.bf16.mxu0 0
  %5581 = vmatpush1.bf16.msra.mxu0 %v5373
  %5582 = vmatprep.subr.bf16.mxu0 0
  %5583 = vmatpush1.bf16.msra.mxu0 %v5372
  %5584 = vmatprep.subr.bf16.mxu0 0
  %5585 = vmatpush2.bf16.msra.mxu0 0
  %5586 = vmatprep.subr.bf16.mxu0 0
  %5587 = vmatpush2.bf16.msra.mxu0 0
  %5588 = vmatprep.subr.bf16.mxu0 0
  %5589 = vmatpush2.bf16.msra.mxu0 0
  %5590 = vmatprep.subr.bf16.mxu0 0
  %5591 = vmatpush2.bf16.msra.mxu0 0
  %5592 = vmatprep.subr.bf16.mxu0 0
  %5593 = vmatpush2.bf16.msra.mxu0 0
  %5594 = vmatprep.subr.bf16.mxu0 0
  %5595 = vmatpush2.bf16.msra.mxu0 0
  %5596 = vmatprep.subr.bf16.mxu0 0
  %5597 = vmatpush2.bf16.msra.mxu0 0
  %5598 = vmatprep.subr.bf16.mxu0 0
  %5599 = vmatpush2.bf16.msra.mxu0 0
  %5600 = vmatprep.mubr.bf16.mxu0 0
  %5601 = vmatmul.mubr.bf16.gmra.mxu0 %v5377
  %v5602 = vpop.f32.mrf.mxu0
  %v5603 = vadd.f32 0.0, %v5602
  %v5604 = vpop.f32.mrf.mxu0
  %v5605 = vpop.f32.mrf.mxu0
  %v5606 = vadd.f32 0.0, %v5605
  %v5607 = vpop.f32.mrf.mxu0
  %5608 = vmatprep.mubr.bf16.mxu0 0
  %5609 = vmatmul.mubr.bf16.gmra.mxu0 %v5380
  %v5610 = vpop.f32.mrf.mxu0
  %v5611 = vadd.f32 0.0, %v5610
  %v5612 = vpop.f32.mrf.mxu0
  %v5613 = vpop.f32.mrf.mxu0
  %v5614 = vadd.f32 0.0, %v5613
  %v5615 = vpop.f32.mrf.mxu0
  %5616 = vmatprep.mubr.bf16.mxu0 0
  %5617 = vmatmul.mubr.bf16.gmra.mxu0 %v5383
  %v5618 = vpop.f32.mrf.mxu0
  %v5619 = vadd.f32 0.0, %v5618
  %v5620 = vpop.f32.mrf.mxu0
  %v5621 = vpop.f32.mrf.mxu0
  %v5622 = vadd.f32 0.0, %v5621
  %v5623 = vpop.f32.mrf.mxu0
  %5624 = vmatprep.mubr.bf16.mxu0 0
  %5625 = vmatmul.mubr.bf16.gmra.mxu0 %v5386
  %v5626 = vpop.f32.mrf.mxu0
  %v5627 = vadd.f32 0.0, %v5626
  %v5628 = vpop.f32.mrf.mxu0
  %v5629 = vpop.f32.mrf.mxu0
  %v5630 = vadd.f32 0.0, %v5629
  %v5631 = vpop.f32.mrf.mxu0
  %5632 = vmatprep.mubr.bf16.mxu0 0
  %5633 = vmatmul.mubr.bf16.gmra.mxu0 %v5389
  %v5634 = vpop.f32.mrf.mxu0
  %v5635 = vadd.f32 0.0, %v5634
  %v5636 = vpop.f32.mrf.mxu0
  %v5637 = vpop.f32.mrf.mxu0
  %v5638 = vadd.f32 0.0, %v5637
  %v5639 = vpop.f32.mrf.mxu0
  %5640 = vmatprep.mubr.bf16.mxu0 0
  %5641 = vmatmul.mubr.bf16.gmra.mxu0 %v5392
  %v5642 = vpop.f32.mrf.mxu0
  %v5643 = vadd.f32 0.0, %v5642
  %v5644 = vpop.f32.mrf.mxu0
  %v5645 = vpop.f32.mrf.mxu0
  %v5646 = vadd.f32 0.0, %v5645
  %v5647 = vpop.f32.mrf.mxu0
  %5648 = vmatprep.mubr.bf16.mxu0 0
  %5649 = vmatmul.mubr.bf16.gmra.mxu0 %v5395
  %v5650 = vpop.f32.mrf.mxu0
  %v5651 = vadd.f32 0.0, %v5650
  %v5652 = vpop.f32.mrf.mxu0
  %v5653 = vpop.f32.mrf.mxu0
  %v5654 = vadd.f32 0.0, %v5653
  %v5655 = vpop.f32.mrf.mxu0
  %5656 = vmatprep.mubr.bf16.mxu0 0
  %5657 = vmatmul.mubr.bf16.gmra.mxu0 %v5398
  %v5658 = vpop.f32.mrf.mxu0
  %v5659 = vpop.f32.mrf.mxu0
  %v5660 = vpop.f32.mrf.mxu0
  %v5661 = vpop.f32.mrf.mxu0
  %5662 = vmatprep.mubr.bf16.mxu0 0
  %5663 = vmatmul.mubr.bf16.gmra.mxu0 %v5401
  %v5664 = vpop.f32.mrf.mxu0
  %v5665 = vpop.f32.mrf.mxu0
  %v5666 = vpop.f32.mrf.mxu0
  %v5667 = vpop.f32.mrf.mxu0
  %5668 = vmatprep.mubr.bf16.mxu0 0
  %5669 = vmatmul.mubr.bf16.gmra.mxu0 %v5404
  %v5670 = vpop.f32.mrf.mxu0
  %v5671 = vadd.f32 0.0, %v5670
  %v5672 = vpop.f32.mrf.mxu0
  %v5673 = vpop.f32.mrf.mxu0
  %v5674 = vadd.f32 0.0, %v5673
  %v5675 = vpop.f32.mrf.mxu0
  %5676 = vmatprep.mubr.bf16.mxu0 0
  %5677 = vmatmul.mubr.bf16.gmra.mxu0 %v5407
  %v5678 = vpop.f32.mrf.mxu0
  %v5679 = vadd.f32 0.0, %v5678
  %v5680 = vpop.f32.mrf.mxu0
  %v5681 = vpop.f32.mrf.mxu0
  %v5682 = vadd.f32 0.0, %v5681
  %v5683 = vpop.f32.mrf.mxu0
  %5684 = vmatprep.mubr.bf16.mxu0 0
  %5685 = vmatmul.mubr.bf16.gmra.mxu0 %v5410
  %v5686 = vpop.f32.mrf.mxu0
  %v5687 = vadd.f32 0.0, %v5686
  %v5688 = vpop.f32.mrf.mxu0
  %v5689 = vpop.f32.mrf.mxu0
  %v5690 = vadd.f32 0.0, %v5689
  %v5691 = vpop.f32.mrf.mxu0
  %5692 = vmatprep.mubr.bf16.mxu0 0
  %5693 = vmatmul.mubr.bf16.gmra.mxu0 %v5413
  %v5694 = vpop.f32.mrf.mxu0
  %v5695 = vadd.f32 0.0, %v5694
  %v5696 = vpop.f32.mrf.mxu0
  %v5697 = vpop.f32.mrf.mxu0
  %v5698 = vadd.f32 0.0, %v5697
  %v5699 = vpop.f32.mrf.mxu0
  %5700 = vmatprep.mubr.bf16.mxu0 0
  %5701 = vmatmul.mubr.bf16.gmra.mxu0 %v5416
  %v5702 = vpop.f32.mrf.mxu0
  %v5703 = vadd.f32 0.0, %v5702
  %v5704 = vpop.f32.mrf.mxu0
  %v5705 = vpop.f32.mrf.mxu0
  %v5706 = vadd.f32 0.0, %v5705
  %v5707 = vpop.f32.mrf.mxu0
  %5708 = vmatprep.mubr.bf16.mxu0 0
  %5709 = vmatmul.mubr.bf16.gmra.mxu0 %v5419
  %v5710 = vpop.f32.mrf.mxu0
  %v5711 = vadd.f32 0.0, %v5710
  %v5712 = vpop.f32.mrf.mxu0
  %v5713 = vpop.f32.mrf.mxu0
  %v5714 = vadd.f32 0.0, %v5713
  %v5715 = vpop.f32.mrf.mxu0
  %5716 = vmatprep.mubr.bf16.mxu0 0
  %5717 = vmatmul.mubr.bf16.gmra.mxu0 %v5422
  %v5718 = vpop.f32.mrf.mxu0
  %v5719 = vadd.f32 0.0, %v5718
  %v5720 = vpop.f32.mrf.mxu0
  %v5721 = vpop.f32.mrf.mxu0
  %v5722 = vadd.f32 0.0, %v5721
  %v5723 = vpop.f32.mrf.mxu0
  %5724 = vmatprep.mubr.bf16.mxu0 0
  %5725 = vmatmul.mubr.bf16.gmra.mxu0 %v5425
  %v5726 = vpop.f32.mrf.mxu0
  %v5727 = vpop.f32.mrf.mxu0
  %v5728 = vpop.f32.mrf.mxu0
  %v5729 = vpop.f32.mrf.mxu0
  %5730 = vmatprep.mubr.bf16.mxu0 0
  %5731 = vmatmul.mubr.bf16.gmra.mxu0 %v5428
  %v5732 = vpop.f32.mrf.mxu0
  %v5733 = vpop.f32.mrf.mxu0
  %v5734 = vpop.f32.mrf.mxu0
  %v5735 = vpop.f32.mrf.mxu0
  %5736 = vmatprep.mubr.bf16.mxu0 0
  %5737 = vmatmul.mubr.bf16.gmra.mxu0 %v5431
  %v5738 = vpop.f32.mrf.mxu0
  %v5739 = vadd.f32 0.0, %v5738
  %v5740 = vpop.f32.mrf.mxu0
  %v5741 = vpop.f32.mrf.mxu0
  %v5742 = vadd.f32 0.0, %v5741
  %v5743 = vpop.f32.mrf.mxu0
  %5744 = vmatprep.mubr.bf16.mxu0 0
  %5745 = vmatmul.mubr.bf16.gmra.mxu0 %v5434
  %v5746 = vpop.f32.mrf.mxu0
  %v5747 = vadd.f32 0.0, %v5746
  %v5748 = vpop.f32.mrf.mxu0
  %v5749 = vpop.f32.mrf.mxu0
  %v5750 = vadd.f32 0.0, %v5749
  %v5751 = vpop.f32.mrf.mxu0
  %5752 = vmatprep.mubr.bf16.mxu0 0
  %5753 = vmatmul.mubr.bf16.gmra.mxu0 %v5437
  %v5754 = vpop.f32.mrf.mxu0
  %v5755 = vadd.f32 0.0, %v5754
  %v5756 = vpop.f32.mrf.mxu0
  %v5757 = vpop.f32.mrf.mxu0
  %v5758 = vadd.f32 0.0, %v5757
  %v5759 = vpop.f32.mrf.mxu0
  %5760 = vmatprep.mubr.bf16.mxu0 0
  %5761 = vmatmul.mubr.bf16.gmra.mxu0 %v5440
  %v5762 = vpop.f32.mrf.mxu0
  %v5763 = vadd.f32 0.0, %v5762
  %v5764 = vpop.f32.mrf.mxu0
  %v5765 = vpop.f32.mrf.mxu0
  %v5766 = vadd.f32 0.0, %v5765
  %v5767 = vpop.f32.mrf.mxu0
  %5768 = vmatprep.mubr.bf16.mxu0 0
  %5769 = vmatmul.mubr.bf16.gmra.mxu0 %v5443
  %v5770 = vpop.f32.mrf.mxu0
  %v5771 = vadd.f32 0.0, %v5770
  %v5772 = vpop.f32.mrf.mxu0
  %v5773 = vpop.f32.mrf.mxu0
  %v5774 = vadd.f32 0.0, %v5773
  %v5775 = vpop.f32.mrf.mxu0
  %5776 = vmatprep.mubr.bf16.mxu0 0
  %5777 = vmatmul.mubr.bf16.gmra.mxu0 %v5446
  %v5778 = vpop.f32.mrf.mxu0
  %v5779 = vadd.f32 0.0, %v5778
  %v5780 = vpop.f32.mrf.mxu0
  %v5781 = vpop.f32.mrf.mxu0
  %v5782 = vadd.f32 0.0, %v5781
  %v5783 = vpop.f32.mrf.mxu0
  %5784 = vmatprep.mubr.bf16.mxu0 0
  %5785 = vmatmul.mubr.bf16.gmra.mxu0 %v5449
  %v5786 = vpop.f32.mrf.mxu0
  %v5787 = vadd.f32 0.0, %v5786
  %v5788 = vpop.f32.mrf.mxu0
  %v5789 = vpop.f32.mrf.mxu0
  %v5790 = vadd.f32 0.0, %v5789
  %v5791 = vpop.f32.mrf.mxu0
  %5792 = vmatprep.mubr.bf16.mxu0 0
  %5793 = vmatmul.mubr.bf16.gmra.mxu0 %v5452
  %v5794 = vpop.f32.mrf.mxu0
  %v5795 = vpop.f32.mrf.mxu0
  %v5796 = vpop.f32.mrf.mxu0
  %v5797 = vpop.f32.mrf.mxu0
  %5798 = vmatprep.mubr.bf16.mxu0 0
  %5799 = vmatmul.mubr.bf16.gmra.mxu0 %v5455
  %v5800 = vpop.f32.mrf.mxu0
  %v5801 = vpop.f32.mrf.mxu0
  %v5802 = vpop.f32.mrf.mxu0
  %v5803 = vpop.f32.mrf.mxu0
  %5804 = vmatprep.mubr.bf16.mxu0 0
  %5805 = vmatmul.mubr.bf16.gmra.mxu0 %v5458
  %v5806 = vpop.f32.mrf.mxu0
  %v5807 = vadd.f32 0.0, %v5806
  %v5808 = vpop.f32.mrf.mxu0
  %v5809 = vpop.f32.mrf.mxu0
  %v5810 = vadd.f32 0.0, %v5809
  %v5811 = vpop.f32.mrf.mxu0
  %5812 = vmatprep.mubr.bf16.mxu0 0
  %5813 = vmatmul.mubr.bf16.gmra.mxu0 %v5461
  %v5814 = vpop.f32.mrf.mxu0
  %v5815 = vadd.f32 0.0, %v5814
  %v5816 = vpop.f32.mrf.mxu0
  %v5817 = vpop.f32.mrf.mxu0
  %v5818 = vadd.f32 0.0, %v5817
  %v5819 = vpop.f32.mrf.mxu0
  %5820 = vmatprep.mubr.bf16.mxu0 0
  %5821 = vmatmul.mubr.bf16.gmra.mxu0 %v5464
  %v5822 = vpop.f32.mrf.mxu0
  %v5823 = vadd.f32 0.0, %v5822
  %v5824 = vpop.f32.mrf.mxu0
  %v5825 = vpop.f32.mrf.mxu0
  %v5826 = vadd.f32 0.0, %v5825
  %v5827 = vpop.f32.mrf.mxu0
  %5828 = vmatprep.mubr.bf16.mxu0 0
  %5829 = vmatmul.mubr.bf16.gmra.mxu0 %v5467
  %v5830 = vpop.f32.mrf.mxu0
  %v5831 = vadd.f32 0.0, %v5830
  %v5832 = vpop.f32.mrf.mxu0
  %v5833 = vpop.f32.mrf.mxu0
  %v5834 = vadd.f32 0.0, %v5833
  %v5835 = vpop.f32.mrf.mxu0
  %5836 = vmatprep.mubr.bf16.mxu0 0
  %5837 = vmatmul.mubr.bf16.gmra.mxu0 %v5470
  %v5838 = vpop.f32.mrf.mxu0
  %v5839 = vadd.f32 0.0, %v5838
  %v5840 = vpop.f32.mrf.mxu0
  %v5841 = vpop.f32.mrf.mxu0
  %v5842 = vadd.f32 0.0, %v5841
  %v5843 = vpop.f32.mrf.mxu0
  %5844 = vmatprep.mubr.bf16.mxu0 0
  %5845 = vmatmul.mubr.bf16.gmra.mxu0 %v5473
  %v5846 = vpop.f32.mrf.mxu0
  %v5847 = vadd.f32 0.0, %v5846
  %v5848 = vpop.f32.mrf.mxu0
  %v5849 = vpop.f32.mrf.mxu0
  %v5850 = vadd.f32 0.0, %v5849
  %v5851 = vpop.f32.mrf.mxu0
  %5852 = vmatprep.mubr.bf16.mxu0 0
  %5853 = vmatmul.mubr.bf16.gmra.mxu0 %v5476
  %v5854 = vpop.f32.mrf.mxu0
  %v5855 = vadd.f32 0.0, %v5854
  %v5856 = vpop.f32.mrf.mxu0
  %v5857 = vpop.f32.mrf.mxu0
  %v5858 = vadd.f32 0.0, %v5857
  %v5859 = vpop.f32.mrf.mxu0
  %5860 = vmatprep.mubr.bf16.mxu0 0
  %5861 = vmatmul.mubr.bf16.gmra.mxu0 %v5479
  %v5862 = vpop.f32.mrf.mxu0
  %v5863 = vpop.f32.mrf.mxu0
  %v5864 = vpop.f32.mrf.mxu0
  %v5865 = vpop.f32.mrf.mxu0
  %5866 = vmatprep.mubr.bf16.mxu0 0
  %5867 = vmatmul.mubr.bf16.gmra.mxu0 %v5482
  %v5868 = vpop.f32.mrf.mxu0
  %v5869 = vpop.f32.mrf.mxu0
  %v5870 = vpop.f32.mrf.mxu0
  %v5871 = vpop.f32.mrf.mxu0
  %5872 = vmatprep.mubr.bf16.mxu0 0
  %5873 = vmatmul.mubr.bf16.gmra.mxu0 %v5485
  %v5874 = vpop.f32.mrf.mxu0
  %v5875 = vadd.f32 0.0, %v5874
  %v5876 = vpop.f32.mrf.mxu0
  %v5877 = vpop.f32.mrf.mxu0
  %v5878 = vadd.f32 0.0, %v5877
  %v5879 = vpop.f32.mrf.mxu0
  %5880 = vmatprep.mubr.bf16.mxu0 0
  %5881 = vmatmul.mubr.bf16.gmra.mxu0 %v5488
  %v5882 = vpop.f32.mrf.mxu0
  %v5883 = vadd.f32 0.0, %v5882
  %v5884 = vpop.f32.mrf.mxu0
  %v5885 = vpop.f32.mrf.mxu0
  %v5886 = vadd.f32 0.0, %v5885
  %v5887 = vpop.f32.mrf.mxu0
  %5888 = vmatprep.mubr.bf16.mxu0 0
  %5889 = vmatmul.mubr.bf16.gmra.mxu0 %v5491
  %v5890 = vpop.f32.mrf.mxu0
  %v5891 = vadd.f32 0.0, %v5890
  %v5892 = vpop.f32.mrf.mxu0
  %v5893 = vpop.f32.mrf.mxu0
  %v5894 = vadd.f32 0.0, %v5893
  %v5895 = vpop.f32.mrf.mxu0
  %5896 = vmatprep.mubr.bf16.mxu0 0
  %5897 = vmatmul.mubr.bf16.gmra.mxu0 %v5494
  %v5898 = vpop.f32.mrf.mxu0
  %v5899 = vadd.f32 0.0, %v5898
  %v5900 = vpop.f32.mrf.mxu0
  %v5901 = vpop.f32.mrf.mxu0
  %v5902 = vadd.f32 0.0, %v5901
  %v5903 = vpop.f32.mrf.mxu0
  %5904 = vmatprep.mubr.bf16.mxu0 0
  %5905 = vmatmul.mubr.bf16.gmra.mxu0 %v5497
  %v5906 = vpop.f32.mrf.mxu0
  %v5907 = vadd.f32 0.0, %v5906
  %v5908 = vpop.f32.mrf.mxu0
  %v5909 = vpop.f32.mrf.mxu0
  %v5910 = vadd.f32 0.0, %v5909
  %v5911 = vpop.f32.mrf.mxu0
  %5912 = vmatprep.mubr.bf16.mxu0 0
  %5913 = vmatmul.mubr.bf16.gmra.mxu0 %v5500
  %v5914 = vpop.f32.mrf.mxu0
  %v5915 = vadd.f32 0.0, %v5914
  %v5916 = vpop.f32.mrf.mxu0
  %v5917 = vpop.f32.mrf.mxu0
  %v5918 = vadd.f32 0.0, %v5917
  %v5919 = vpop.f32.mrf.mxu0
  %5920 = vmatprep.mubr.bf16.mxu0 0
  %5921 = vmatmul.mubr.bf16.gmra.mxu0 %v5503
  %v5922 = vpop.f32.mrf.mxu0
  %v5923 = vadd.f32 0.0, %v5922
  %v5924 = vpop.f32.mrf.mxu0
  %v5925 = vpop.f32.mrf.mxu0
  %v5926 = vadd.f32 0.0, %v5925
  %v5927 = vpop.f32.mrf.mxu0
  %5928 = vmatprep.mubr.bf16.mxu0 0
  %5929 = vmatmul.mubr.bf16.gmra.mxu0 %v5506
  %v5930 = vpop.f32.mrf.mxu0
  %v5931 = vpop.f32.mrf.mxu0
  %v5932 = vpop.f32.mrf.mxu0
  %v5933 = vpop.f32.mrf.mxu0
  %5934 = vmatprep.mubr.bf16.mxu0 0
  %5935 = vmatmul.mubr.bf16.gmra.mxu0 %v5509
  %v5936 = vpop.f32.mrf.mxu0
  %v5937 = vpop.f32.mrf.mxu0
  %v5938 = vpop.f32.mrf.mxu0
  %v5939 = vpop.f32.mrf.mxu0
  %5940 = vmatprep.mubr.bf16.mxu0 0
  %5941 = vmatmul.mubr.bf16.gmra.mxu0 %v5512
  %v5942 = vpop.f32.mrf.mxu0
  %v5943 = vadd.f32 0.0, %v5942
  %v5944 = vpop.f32.mrf.mxu0
  %v5945 = vpop.f32.mrf.mxu0
  %v5946 = vadd.f32 0.0, %v5945
  %v5947 = vpop.f32.mrf.mxu0
  %5948 = vmatprep.mubr.bf16.mxu0 0
  %5949 = vmatmul.mubr.bf16.gmra.mxu0 %v5515
  %v5950 = vpop.f32.mrf.mxu0
  %v5951 = vadd.f32 0.0, %v5950
  %v5952 = vpop.f32.mrf.mxu0
  %v5953 = vpop.f32.mrf.mxu0
  %v5954 = vadd.f32 0.0, %v5953
  %v5955 = vpop.f32.mrf.mxu0
  %5956 = vmatprep.mubr.bf16.mxu0 0
  %5957 = vmatmul.mubr.bf16.gmra.mxu0 %v5518
  %v5958 = vpop.f32.mrf.mxu0
  %v5959 = vadd.f32 0.0, %v5958
  %v5960 = vpop.f32.mrf.mxu0
  %v5961 = vpop.f32.mrf.mxu0
  %v5962 = vadd.f32 0.0, %v5961
  %v5963 = vpop.f32.mrf.mxu0
  %5964 = vmatprep.mubr.bf16.mxu0 0
  %5965 = vmatmul.mubr.bf16.gmra.mxu0 %v5521
  %v5966 = vpop.f32.mrf.mxu0
  %v5967 = vadd.f32 0.0, %v5966
  %v5968 = vpop.f32.mrf.mxu0
  %v5969 = vpop.f32.mrf.mxu0
  %v5970 = vadd.f32 0.0, %v5969
  %v5971 = vpop.f32.mrf.mxu0
  %5972 = vmatprep.mubr.bf16.mxu0 0
  %5973 = vmatmul.mubr.bf16.gmra.mxu0 %v5524
  %v5974 = vpop.f32.mrf.mxu0
  %v5975 = vadd.f32 0.0, %v5974
  %v5976 = vpop.f32.mrf.mxu0
  %v5977 = vpop.f32.mrf.mxu0
  %v5978 = vadd.f32 0.0, %v5977
  %v5979 = vpop.f32.mrf.mxu0
  %5980 = vmatprep.mubr.bf16.mxu0 0
  %5981 = vmatmul.mubr.bf16.gmra.mxu0 %v5527
  %v5982 = vpop.f32.mrf.mxu0
  %v5983 = vadd.f32 0.0, %v5982
  %v5984 = vpop.f32.mrf.mxu0
  %v5985 = vpop.f32.mrf.mxu0
  %v5986 = vadd.f32 0.0, %v5985
  %v5987 = vpop.f32.mrf.mxu0
  %5988 = vmatprep.mubr.bf16.mxu0 0
  %5989 = vmatmul.mubr.bf16.gmra.mxu0 %v5530
  %v5990 = vpop.f32.mrf.mxu0
  %v5991 = vadd.f32 0.0, %v5990
  %v5992 = vpop.f32.mrf.mxu0
  %v5993 = vpop.f32.mrf.mxu0
  %v5994 = vadd.f32 0.0, %v5993
  %v5995 = vpop.f32.mrf.mxu0
  %5996 = vmatprep.mubr.bf16.mxu0 0
  %5997 = vmatmul.mubr.bf16.gmra.mxu0 %v5533
  %v5998 = vpop.f32.mrf.mxu0
  %v5999 = vpop.f32.mrf.mxu0
  %v6000 = vpop.f32.mrf.mxu0
  %v6001 = vpop.f32.mrf.mxu0
  %6002 = vmatprep.mubr.bf16.mxu0 0
  %6003 = vmatmul.mubr.bf16.gmra.mxu0 %v5536
  %v6004 = vpop.f32.mrf.mxu0
  %v6005 = vpop.f32.mrf.mxu0
  %v6006 = vpop.f32.mrf.mxu0
  %v6007 = vpop.f32.mrf.mxu0
  %6008 = vmatprep.mubr.bf16.mxu0 0
  %6009 = vmatmul.mubr.bf16.gmra.mxu0 %v5539
  %v6010 = vpop.f32.mrf.mxu0
  %v6011 = vadd.f32 0.0, %v6010
  %v6012 = vpop.f32.mrf.mxu0
  %v6013 = vpop.f32.mrf.mxu0
  %v6014 = vadd.f32 0.0, %v6013
  %v6015 = vpop.f32.mrf.mxu0
  %6016 = vmatprep.mubr.bf16.mxu0 0
  %6017 = vmatmul.mubr.bf16.gmra.mxu0 %v5542
  %v6018 = vpop.f32.mrf.mxu0
  %v6019 = vadd.f32 0.0, %v6018
  %v6020 = vpop.f32.mrf.mxu0
  %v6021 = vpop.f32.mrf.mxu0
  %v6022 = vadd.f32 0.0, %v6021
  %v6023 = vpop.f32.mrf.mxu0
  %6024 = vmatprep.mubr.bf16.mxu0 0
  %6025 = vmatmul.mubr.bf16.gmra.mxu0 %v5545
  %v6026 = vpop.f32.mrf.mxu0
  %v6027 = vadd.f32 0.0, %v6026
  %v6028 = vpop.f32.mrf.mxu0
  %v6029 = vpop.f32.mrf.mxu0
  %v6030 = vadd.f32 0.0, %v6029
  %v6031 = vpop.f32.mrf.mxu0
  %6032 = vmatprep.mubr.bf16.mxu0 0
  %6033 = vmatmul.mubr.bf16.gmra.mxu0 %v5548
  %v6034 = vpop.f32.mrf.mxu0
  %v6035 = vadd.f32 0.0, %v6034
  %v6036 = vpop.f32.mrf.mxu0
  %v6037 = vpop.f32.mrf.mxu0
  %v6038 = vadd.f32 0.0, %v6037
  %v6039 = vpop.f32.mrf.mxu0
  %6040 = vmatprep.mubr.bf16.mxu0 0
  %6041 = vmatmul.mubr.bf16.gmra.mxu0 %v5551
  %v6042 = vpop.f32.mrf.mxu0
  %v6043 = vadd.f32 0.0, %v6042
  %v6044 = vpop.f32.mrf.mxu0
  %v6045 = vpop.f32.mrf.mxu0
  %v6046 = vadd.f32 0.0, %v6045
  %v6047 = vpop.f32.mrf.mxu0
  %6048 = vmatprep.mubr.bf16.mxu0 0
  %6049 = vmatmul.mubr.bf16.gmra.mxu0 %v5554
  %v6050 = vpop.f32.mrf.mxu0
  %v6051 = vadd.f32 0.0, %v6050
  %v6052 = vpop.f32.mrf.mxu0
  %v6053 = vpop.f32.mrf.mxu0
  %v6054 = vadd.f32 0.0, %v6053
  %v6055 = vpop.f32.mrf.mxu0
  %6056 = vmatprep.mubr.bf16.mxu0 0
  %6057 = vmatmul.mubr.bf16.gmra.mxu0 %v5557
  %v6058 = vpop.f32.mrf.mxu0
  %v6059 = vadd.f32 0.0, %v6058
  %v6060 = vpop.f32.mrf.mxu0
  %v6061 = vpop.f32.mrf.mxu0
  %v6062 = vadd.f32 0.0, %v6061
  %v6063 = vpop.f32.mrf.mxu0
  %6064 = vmatprep.mubr.bf16.mxu0 0
  %6065 = vmatmul.mubr.bf16.gmra.mxu0 %v5560
  %v6066 = vpop.f32.mrf.mxu0
  %v6067 = vpop.f32.mrf.mxu0
  %v6068 = vpop.f32.mrf.mxu0
  %v6069 = vpop.f32.mrf.mxu0
  %6070 = vmatprep.mubr.bf16.mxu0 0
  %6071 = vmatmul.mubr.bf16.gmra.mxu0 %v5563
  %v6072 = vpop.f32.mrf.mxu0
  %v6073 = vpop.f32.mrf.mxu0
  %v6074 = vpop.f32.mrf.mxu0
  %v6075 = vpop.f32.mrf.mxu0
  %6076 = vmatprep.mubr.bf16.mxu0 0
  %6077 = vmatmul.mubr.bf16.gmra.mxu0 %v5566
  %v6078 = vpop.f32.mrf.mxu0
  %v6079 = vpop.f32.mrf.mxu0
  %v6080 = vpop.f32.mrf.mxu0
  %v6081 = vpop.f32.mrf.mxu0
  %6082 = vdwg.mxu0
  %v6083 = vadd.f32 %v4812, %v5603
  %v6084 = vadd.f32 %v4813, %v5606
  %v6085 = vadd.f32 %v4814, %v5611
  %v6086 = vadd.f32 %v4815, %v5614
  %v6087 = vadd.f32 %v4816, %v5619
  %v6088 = vadd.f32 %v4817, %v5622
  %v6089 = vadd.f32 %v4818, %v5627
  %v6090 = vadd.f32 %v4819, %v5630
  %v6091 = vadd.f32 %v4820, %v5635
  %v6092 = vadd.f32 %v4821, %v5638
  %v6093 = vadd.f32 %v4822, %v5643
  %v6094 = vadd.f32 %v4823, %v5646
  %v6095 = vadd.f32 %v4824, %v5651
  %v6096 = vadd.f32 %v4825, %v5654
  %v6097 = vadd.f32 %v4826, %v5671
  %v6098 = vadd.f32 %v4827, %v5674
  %v6099 = vadd.f32 %v4828, %v5679
  %v6100 = vadd.f32 %v4829, %v5682
  %v6101 = vadd.f32 %v4830, %v5687
  %v6102 = vadd.f32 %v4831, %v5690
  %v6103 = vadd.f32 %v4832, %v5695
  %v6104 = vadd.f32 %v4833, %v5698
  %v6105 = vadd.f32 %v4834, %v5703
  %v6106 = vadd.f32 %v4835, %v5706
  %v6107 = vadd.f32 %v4836, %v5711
  %v6108 = vadd.f32 %v4837, %v5714
  %v6109 = vadd.f32 %v4838, %v5719
  %v6110 = vadd.f32 %v4839, %v5722
  %v6111 = vadd.f32 %v4840, %v5739
  %v6112 = vadd.f32 %v4841, %v5742
  %v6113 = vadd.f32 %v4842, %v5747
  %v6114 = vadd.f32 %v4843, %v5750
  %v6115 = vadd.f32 %v4844, %v5755
  %v6116 = vadd.f32 %v4845, %v5758
  %v6117 = vadd.f32 %v4846, %v5763
  %v6118 = vadd.f32 %v4847, %v5766
  %v6119 = vadd.f32 %v4848, %v5771
  %v6120 = vadd.f32 %v4849, %v5774
  %v6121 = vadd.f32 %v4850, %v5779
  %v6122 = vadd.f32 %v4851, %v5782
  %v6123 = vadd.f32 %v4852, %v5787
  %v6124 = vadd.f32 %v4853, %v5790
  %v6125 = vadd.f32 %v4854, %v5807
  %v6126 = vadd.f32 %v4855, %v5810
  %v6127 = vadd.f32 %v4856, %v5815
  %v6128 = vadd.f32 %v4857, %v5818
  %v6129 = vadd.f32 %v4858, %v5823
  %v6130 = vadd.f32 %v4859, %v5826
  %v6131 = vadd.f32 %v4860, %v5831
  %v6132 = vadd.f32 %v4861, %v5834
  %v6133 = vadd.f32 %v4862, %v5839
  %v6134 = vadd.f32 %v4863, %v5842
  %v6135 = vadd.f32 %v4864, %v5847
  %v6136 = vadd.f32 %v4865, %v5850
  %v6137 = vadd.f32 %v4866, %v5855
  %v6138 = vadd.f32 %v4867, %v5858
  %v6139 = vadd.f32 %v4868, %v5875
  %v6140 = vadd.f32 %v4869, %v5878
  %v6141 = vadd.f32 %v4870, %v5883
  %v6142 = vadd.f32 %v4871, %v5886
  %v6143 = vadd.f32 %v4872, %v5891
  %v6144 = vadd.f32 %v4873, %v5894
  %v6145 = vadd.f32 %v4874, %v5899
  %v6146 = vadd.f32 %v4875, %v5902
  %v6147 = vadd.f32 %v4876, %v5907
  %v6148 = vadd.f32 %v4877, %v5910
  %v6149 = vadd.f32 %v4878, %v5915
  %v6150 = vadd.f32 %v4879, %v5918
  %v6151 = vadd.f32 %v4880, %v5923
  %v6152 = vadd.f32 %v4881, %v5926
  %v6153 = vadd.f32 %v4882, %v5943
  %v6154 = vadd.f32 %v4883, %v5946
  %v6155 = vadd.f32 %v4884, %v5951
  %v6156 = vadd.f32 %v4885, %v5954
  %v6157 = vadd.f32 %v4886, %v5959
  %v6158 = vadd.f32 %v4887, %v5962
  %v6159 = vadd.f32 %v4888, %v5967
  %v6160 = vadd.f32 %v4889, %v5970
  %v6161 = vadd.f32 %v4890, %v5975
  %v6162 = vadd.f32 %v4891, %v5978
  %v6163 = vadd.f32 %v4892, %v5983
  %v6164 = vadd.f32 %v4893, %v5986
  %v6165 = vadd.f32 %v4894, %v5991
  %v6166 = vadd.f32 %v4895, %v5994
  %v6167 = vadd.f32 %v4896, %v6011
  %v6168 = vadd.f32 %v4897, %v6014
  %v6169 = vadd.f32 %v4898, %v6019
  %v6170 = vadd.f32 %v4899, %v6022
  %v6171 = vadd.f32 %v4900, %v6027
  %v6172 = vadd.f32 %v4901, %v6030
  %v6173 = vadd.f32 %v4902, %v6035
  %v6174 = vadd.f32 %v4903, %v6038
  %v6175 = vadd.f32 %v4904, %v6043
  %v6176 = vadd.f32 %v4905, %v6046
  %v6177 = vadd.f32 %v4906, %v6051
  %v6178 = vadd.f32 %v4907, %v6054
  %v6179 = vadd.f32 %v4908, %v6059
  %v6180 = vadd.f32 %v4909, %v6062
  %s6181 = scalar_lea.vmem %s0, 88
  %v6182 = vld [vmem:[%s6181] sm:$0xf]
  %v6183 = vld [vmem:[%s6181 + $0x4] sm:$0xf]
  %v6184 = vld [vmem:[%s6181 + $0x8] sm:$0xf]
  %v6185 = vld [vmem:[%s6181 + $0xc] sm:$0xf]
  %v6186 = vld [vmem:[%s6181 + $0x10] sm:$0xf]
  %v6187 = vld [vmem:[%s6181 + $0x14] sm:$0xf]
  %v6188 = vld [vmem:[%s6181 + $0x18] sm:$0xf]
  %v6189 = vld [vmem:[%s6181 + $0x1c] sm:$0xf]
  %v6190 = vld [vmem:[%s6181 + $0x20] sm:$0xf]
  %v6191 = vld [vmem:[%s6181 + $0x24] sm:$0xf]
  %v6192 = vld [vmem:[%s6181 + $0x28] sm:$0xf]
  %v6193 = vld [vmem:[%s6181 + $0x2c] sm:$0xf]
  %v6194 = vld [vmem:[%s6181 + $0x30] sm:$0xf]
  %v6195 = vld [vmem:[%s6181 + $0x34] sm:$0xf]
  %v6196 = vld [vmem:[%s6181 + $0x38] sm:$0xf]
  %v6197 = vld [vmem:[%s6181 + $0x3c] sm:$0xf]
  %v6198 = vld [vmem:[%s6181 + $0x40] sm:$0xf]
  %v6199 = vld [vmem:[%s6181 + $0x44] sm:$0xf]
  %v6200 = vld [vmem:[%s6181 + $0x48] sm:$0xf]
  %v6201 = vld [vmem:[%s6181 + $0x4c] sm:$0xf]
  %v6202 = vld [vmem:[%s6181 + $0x50] sm:$0xf]
  %v6203 = vld [vmem:[%s6181 + $0x54] sm:$0xf]
  %v6204 = vld [vmem:[%s6181 + $0x58] sm:$0xf]
  %v6205 = vld [vmem:[%s6181 + $0x5c] sm:$0xf]
  %v6206 = vld [vmem:[%s6181 + $0x60] sm:$0xf]
  %v6207 = vld [vmem:[%s6181 + $0x64] sm:$0xf]
  %v6208 = vld [vmem:[%s6181 + $0x68] sm:$0xf]
  %v6209 = vld [vmem:[%s6181 + $0x6c] sm:$0xf]
  %v6210 = vld [vmem:[%s6181 + $0x70] sm:$0xf]
  %v6211 = vld [vmem:[%s6181 + $0x74] sm:$0xf]
  %v6212 = vld [vmem:[%s6181 + $0x78] sm:$0xf]
  %v6213 = vld [vmem:[%s6181 + $0x7c] sm:$0xf]
  %v6214 = vld [vmem:[%s6181 + $0x80] sm:$0xf]
  %v6215 = vld [vmem:[%s6181 + $0x84] sm:$0xf]
  %v6216 = vld [vmem:[%s6181 + $0x88] sm:$0xf]
  %v6217 = vld [vmem:[%s6181 + $0x8c] sm:$0xf]
  %v6218 = vld [vmem:[%s6181 + $0x90] sm:$0xf]
  %v6219 = vld [vmem:[%s6181 + $0x94] sm:$0xf]
  %v6220 = vld [vmem:[%s6181 + $0x98] sm:$0xf]
  %v6221 = vld [vmem:[%s6181 + $0x9c] sm:$0xf]
  %v6222 = vld [vmem:[%s6181 + $0xa0] sm:$0xf]
  %v6223 = vld [vmem:[%s6181 + $0xa4] sm:$0xf]
  %v6224 = vld [vmem:[%s6181 + $0xa8] sm:$0xf]
  %v6225 = vld [vmem:[%s6181 + $0xac] sm:$0xf]
  %v6226 = vld [vmem:[%s6181 + $0xb0] sm:$0xf]
  %v6227 = vld [vmem:[%s6181 + $0xb4] sm:$0xf]
  %v6228 = vld [vmem:[%s6181 + $0xb8] sm:$0xf]
  %v6229 = vld [vmem:[%s6181 + $0xbc] sm:$0xf]
  %v6230 = vld [vmem:[%s6181 + $0xc0] sm:$0xf]
  %v6231 = vld [vmem:[%s6181 + $0xc4] sm:$0xf]
  %v6232 = vld [vmem:[%s6181 + $0xc8] sm:$0xf]
  %v6233 = vld [vmem:[%s6181 + $0xcc] sm:$0xf]
  %v6234 = vld [vmem:[%s6181 + $0xd0] sm:$0xf]
  %v6235 = vld [vmem:[%s6181 + $0xd4] sm:$0xf]
  %v6236 = vld [vmem:[%s6181 + $0xd8] sm:$0xf]
  %v6237 = vld [vmem:[%s6181 + $0xdc] sm:$0xf]
  %v6238 = vld [vmem:[%s6181 + $0xe0] sm:$0xf]
  %v6239 = vld [vmem:[%s6181 + $0xe4] sm:$0xf]
  %v6240 = vld [vmem:[%s6181 + $0xe8] sm:$0xf]
  %v6241 = vld [vmem:[%s6181 + $0xec] sm:$0xf]
  %v6242 = vld [vmem:[%s6181 + $0xf0] sm:$0xf]
  %v6243 = vld [vmem:[%s6181 + $0xf4] sm:$0xf]
  %v6244 = vld [vmem:[%s6181 + $0xf8] sm:$0xf]
  %v6245 = vld [vmem:[%s6181 + $0xfc] sm:$0xf]
  %v6246 = vld [vmem:[%s6181 + $0x100] sm:$0xf]
  %v6247 = vld [vmem:[%s6181 + $0x104] sm:$0xf]
  %v6248 = vld [vmem:[%s6181 + $0x108] sm:$0xf]
  %v6249 = vld [vmem:[%s6181 + $0x10c] sm:$0xf]
  %v6250 = vld [vmem:[%s6181 + $0x110] sm:$0xf]
  %v6251 = vld [vmem:[%s6181 + $0x114] sm:$0xf]
  %v6252 = vld [vmem:[%s6181 + $0x118] sm:$0xf]
  %v6253 = vld [vmem:[%s6181 + $0x11c] sm:$0xf]
  %v6254 = vld [vmem:[%s6181 + $0x120] sm:$0xf]
  %v6255 = vld [vmem:[%s6181 + $0x124] sm:$0xf]
  %v6256 = vld [vmem:[%s6181 + $0x128] sm:$0xf]
  %v6257 = vld [vmem:[%s6181 + $0x12c] sm:$0xf]
  %v6258 = vld [vmem:[%s6181 + $0x130] sm:$0xf]
  %v6259 = vld [vmem:[%s6181 + $0x134] sm:$0xf]
  %v6260 = vld [vmem:[%s6181 + $0x138] sm:$0xf]
  %v6261 = vld [vmem:[%s6181 + $0x13c] sm:$0xf]
  %v6262 = vld [vmem:[%s6181 + $0x140] sm:$0xf]
  %v6263 = vld [vmem:[%s6181 + $0x144] sm:$0xf]
  %v6264 = vld [vmem:[%s6181 + $0x148] sm:$0xf]
  %v6265 = vld [vmem:[%s6181 + $0x14c] sm:$0xf]
  %v6266 = vld [vmem:[%s6181 + $0x150] sm:$0xf]
  %v6267 = vld [vmem:[%s6181 + $0x154] sm:$0xf]
  %v6268 = vld [vmem:[%s6181 + $0x158] sm:$0xf]
  %v6269 = vld [vmem:[%s6181 + $0x15c] sm:$0xf]
  %v6270 = vld [vmem:[%s6181 + $0x160] sm:$0xf]
  %v6271 = vld [vmem:[%s6181 + $0x164] sm:$0xf]
  %v6272 = vld [vmem:[%s6181 + $0x168] sm:$0xf]
  %v6273 = vld [vmem:[%s6181 + $0x16c] sm:$0xf]
  %v6274 = vld [vmem:[%s6181 + $0x170] sm:$0xf]
  %v6275 = vld [vmem:[%s6181 + $0x174] sm:$0xf]
  %v6276 = vld [vmem:[%s6181 + $0x178] sm:$0xf]
  %v6277 = vld [vmem:[%s6181 + $0x17c] sm:$0xf]
  %v6278 = vld [vmem:[%s6181 + $0x180] sm:$0xf]
  %v6279 = vld [vmem:[%s6181 + $0x184] sm:$0xf]
  %v6280 = vld [vmem:[%s6181 + $0x188] sm:$0xf]
  %v6281 = vld [vmem:[%s6181 + $0x18c] sm:$0xf]
  %v6282 = vld [vmem:[%s6181 + $0x190] sm:$0xf]
  %v6283 = vld [vmem:[%s6181 + $0x194] sm:$0xf]
  %v6284 = vld [vmem:[%s6181 + $0x198] sm:$0xf]
  %v6285 = vld [vmem:[%s6181 + $0x19c] sm:$0xf]
  %v6286 = vld [vmem:[%s6181 + $0x1a0] sm:$0xf]
  %v6287 = vld [vmem:[%s6181 + $0x1a4] sm:$0xf]
  %v6288 = vld [vmem:[%s6181 + $0x1a8] sm:$0xf]
  %v6289 = vld [vmem:[%s6181 + $0x1ac] sm:$0xf]
  %v6290 = vld [vmem:[%s6181 + $0x1b0] sm:$0xf]
  %v6291 = vld [vmem:[%s6181 + $0x1b4] sm:$0xf]
  %v6292 = vld [vmem:[%s6181 + $0x1b8] sm:$0xf]
  %v6293 = vld [vmem:[%s6181 + $0x1bc] sm:$0xf]
  %v6294 = vld [vmem:[%s6181 + $0x1c0] sm:$0xf]
  %v6295 = vld [vmem:[%s6181 + $0x1c4] sm:$0xf]
  %v6296 = vld [vmem:[%s6181 + $0x1c8] sm:$0xf]
  %v6297 = vld [vmem:[%s6181 + $0x1cc] sm:$0xf]
  %v6298 = vld [vmem:[%s6181 + $0x1d0] sm:$0xf]
  %v6299 = vld [vmem:[%s6181 + $0x1d4] sm:$0xf]
  %v6300 = vld [vmem:[%s6181 + $0x1d8] sm:$0xf]
  %v6301 = vld [vmem:[%s6181 + $0x1dc] sm:$0xf]
  %v6302 = vld [vmem:[%s6181 + $0x1e0] sm:$0xf]
  %v6303 = vld [vmem:[%s6181 + $0x1e4] sm:$0xf]
  %v6304 = vld [vmem:[%s6181 + $0x1e8] sm:$0xf]
  %v6305 = vld [vmem:[%s6181 + $0x1ec] sm:$0xf]
  %v6306 = vld [vmem:[%s6181 + $0x1f0] sm:$0xf]
  %v6307 = vld [vmem:[%s6181 + $0x1f4] sm:$0xf]
  %v6308 = vld [vmem:[%s6181 + $0x1f8] sm:$0xf]
  %v6309 = vld [vmem:[%s6181 + $0x1fc] sm:$0xf]
  %s6310 = scalar_lea.vmem %s1, 80
  %v6311 = vld [vmem:[%s6310] sm:$0xf]
  %v6312 = vld [vmem:[%s6310 + $0x4] sm:$0xf]
  %v6313 = vld [vmem:[%s6310 + $0x8] sm:$0xf]
  %v6314 = vld [vmem:[%s6310 + $0xc] sm:$0xf]
  %v6443 = vunpack.c.l.b16 %v6182
  %v6444 = vunpack.c.l.b16 %v6183
  %v6445 = vunpack.c.l.b16 %v6184
  %v6446 = vunpack.c.l.b16 %v6185
  %v6447 = vunpack.c.l.b16 %v6186
  %v6448 = vunpack.c.l.b16 %v6187
  %v6449 = vunpack.c.l.b16 %v6188
  %v6450 = vunpack.c.l.b16 %v6189
  %v6451 = vunpack.c.l.b16 %v6190
  %v6452 = vunpack.c.l.b16 %v6191
  %v6453 = vunpack.c.l.b16 %v6192
  %v6454 = vunpack.c.l.b16 %v6193
  %v6455 = vunpack.c.l.b16 %v6194
  %v6456 = vunpack.c.l.b16 %v6195
  %v6457 = vunpack.c.l.b16 %v6196
  %v6458 = vunpack.c.l.b16 %v6197
  %v6459 = vunpack.c.l.b16 %v6198
  %v6460 = vunpack.c.l.b16 %v6199
  %v6461 = vunpack.c.l.b16 %v6200
  %v6462 = vunpack.c.l.b16 %v6201
  %v6463 = vunpack.c.l.b16 %v6202
  %v6464 = vunpack.c.l.b16 %v6203
  %v6465 = vunpack.c.l.b16 %v6204
  %v6466 = vunpack.c.l.b16 %v6205
  %v6467 = vunpack.c.l.b16 %v6206
  %v6468 = vunpack.c.l.b16 %v6207
  %v6469 = vunpack.c.l.b16 %v6208
  %v6470 = vunpack.c.l.b16 %v6209
  %v6471 = vunpack.c.l.b16 %v6210
  %v6472 = vunpack.c.l.b16 %v6211
  %v6473 = vunpack.c.l.b16 %v6212
  %v6474 = vunpack.c.l.b16 %v6213
  %v6475 = vunpack.c.l.b16 %v6214
  %v6476 = vunpack.c.l.b16 %v6215
  %v6477 = vunpack.c.l.b16 %v6216
  %v6478 = vunpack.c.l.b16 %v6217
  %v6479 = vunpack.c.l.b16 %v6218
  %v6480 = vunpack.c.l.b16 %v6219
  %v6481 = vunpack.c.l.b16 %v6220
  %v6482 = vunpack.c.l.b16 %v6221
  %v6483 = vunpack.c.l.b16 %v6222
  %v6484 = vunpack.c.l.b16 %v6223
  %v6485 = vunpack.c.l.b16 %v6224
  %v6486 = vunpack.c.l.b16 %v6225
  %v6487 = vunpack.c.l.b16 %v6226
  %v6488 = vunpack.c.l.b16 %v6227
  %v6489 = vunpack.c.l.b16 %v6228
  %v6490 = vunpack.c.l.b16 %v6229
  %v6491 = vunpack.c.l.b16 %v6230
  %v6492 = vunpack.c.l.b16 %v6231
  %v6493 = vunpack.c.l.b16 %v6232
  %v6494 = vunpack.c.l.b16 %v6233
  %v6495 = vunpack.c.l.b16 %v6234
  %v6496 = vunpack.c.l.b16 %v6235
  %v6497 = vunpack.c.l.b16 %v6236
  %v6498 = vunpack.c.l.b16 %v6237
  %v6499 = vunpack.c.l.b16 %v6238
  %v6500 = vunpack.c.l.b16 %v6239
  %v6501 = vunpack.c.l.b16 %v6240
  %v6502 = vunpack.c.l.b16 %v6241
  %v6503 = vunpack.c.l.b16 %v6242
  %v6504 = vunpack.c.l.b16 %v6243
  %v6505 = vunpack.c.l.b16 %v6244
  %v6506 = vunpack.c.l.b16 %v6245
  %v6507 = vunpack.c.l.b16 %v6246
  %v6508 = vunpack.c.l.b16 %v6247
  %v6509 = vunpack.c.l.b16 %v6248
  %v6510 = vunpack.c.l.b16 %v6249
  %v6511 = vunpack.c.l.b16 %v6250
  %v6512 = vunpack.c.l.b16 %v6251
  %v6513 = vunpack.c.l.b16 %v6252
  %v6514 = vunpack.c.l.b16 %v6253
  %v6515 = vunpack.c.l.b16 %v6254
  %v6516 = vunpack.c.l.b16 %v6255
  %v6517 = vunpack.c.l.b16 %v6256
  %v6518 = vunpack.c.l.b16 %v6257
  %v6519 = vunpack.c.l.b16 %v6258
  %v6520 = vunpack.c.l.b16 %v6259
  %v6521 = vunpack.c.l.b16 %v6260
  %v6522 = vunpack.c.l.b16 %v6261
  %v6523 = vunpack.c.l.b16 %v6262
  %v6524 = vunpack.c.l.b16 %v6263
  %v6525 = vunpack.c.l.b16 %v6264
  %v6526 = vunpack.c.l.b16 %v6265
  %v6527 = vunpack.c.l.b16 %v6266
  %v6528 = vunpack.c.l.b16 %v6267
  %v6529 = vunpack.c.l.b16 %v6268
  %v6530 = vunpack.c.l.b16 %v6269
  %v6531 = vunpack.c.l.b16 %v6270
  %v6532 = vunpack.c.l.b16 %v6271
  %v6533 = vunpack.c.l.b16 %v6272
  %v6534 = vunpack.c.l.b16 %v6273
  %v6535 = vunpack.c.l.b16 %v6274
  %v6536 = vunpack.c.l.b16 %v6275
  %v6537 = vunpack.c.l.b16 %v6276
  %v6538 = vunpack.c.l.b16 %v6277
  %v6539 = vunpack.c.l.b16 %v6278
  %v6540 = vunpack.c.l.b16 %v6279
  %v6541 = vunpack.c.l.b16 %v6280
  %v6542 = vunpack.c.l.b16 %v6281
  %v6543 = vunpack.c.l.b16 %v6282
  %v6544 = vunpack.c.l.b16 %v6283
  %v6545 = vunpack.c.l.b16 %v6284
  %v6546 = vunpack.c.l.b16 %v6285
  %v6547 = vunpack.c.l.b16 %v6286
  %v6548 = vunpack.c.l.b16 %v6287
  %v6549 = vunpack.c.l.b16 %v6288
  %v6550 = vunpack.c.l.b16 %v6289
  %v6551 = vunpack.c.l.b16 %v6290
  %v6552 = vunpack.c.l.b16 %v6291
  %v6553 = vunpack.c.l.b16 %v6292
  %v6554 = vunpack.c.l.b16 %v6293
  %v6555 = vunpack.c.l.b16 %v6294
  %v6556 = vunpack.c.l.b16 %v6295
  %v6557 = vunpack.c.l.b16 %v6296
  %v6558 = vunpack.c.l.b16 %v6297
  %v6559 = vunpack.c.l.b16 %v6298
  %v6560 = vunpack.c.l.b16 %v6299
  %v6561 = vunpack.c.l.b16 %v6300
  %v6562 = vunpack.c.l.b16 %v6301
  %v6563 = vunpack.c.l.b16 %v6302
  %v6564 = vunpack.c.l.b16 %v6303
  %v6565 = vunpack.c.l.b16 %v6304
  %v6566 = vunpack.c.l.b16 %v6305
  %v6567 = vunpack.c.l.b16 %v6306
  %v6568 = vunpack.c.l.b16 %v6307
  %v6569 = vunpack.c.l.b16 %v6308
  %v6570 = vunpack.c.l.b16 %v6309
  %v6571 = vpack.c.b16 %v6444, %v6443
  %v6572 = vpack.c.b16 %v6446, %v6445
  %v6573 = vpack.c.b16 %v6448, %v6447
  %v6574 = vpack.c.b16 %v6450, %v6449
  %v6575 = vpack.c.b16 %v6452, %v6451
  %v6576 = vpack.c.b16 %v6454, %v6453
  %v6577 = vpack.c.b16 %v6456, %v6455
  %v6578 = vpack.c.b16 %v6458, %v6457
  %v6579 = vpack.c.b16 %v6460, %v6459
  %v6580 = vpack.c.b16 %v6462, %v6461
  %v6581 = vpack.c.b16 %v6464, %v6463
  %v6582 = vpack.c.b16 %v6466, %v6465
  %v6583 = vpack.c.b16 %v6468, %v6467
  %v6584 = vpack.c.b16 %v6470, %v6469
  %v6585 = vpack.c.b16 %v6472, %v6471
  %v6586 = vpack.c.b16 %v6474, %v6473
  %v6587 = vpack.c.b16 %v6476, %v6475
  %v6588 = vpack.c.b16 %v6478, %v6477
  %v6589 = vpack.c.b16 %v6480, %v6479
  %v6590 = vpack.c.b16 %v6482, %v6481
  %v6591 = vpack.c.b16 %v6484, %v6483
  %v6592 = vpack.c.b16 %v6486, %v6485
  %v6593 = vpack.c.b16 %v6488, %v6487
  %v6594 = vpack.c.b16 %v6490, %v6489
  %v6595 = vpack.c.b16 %v6492, %v6491
  %v6596 = vpack.c.b16 %v6494, %v6493
  %v6597 = vpack.c.b16 %v6496, %v6495
  %v6598 = vpack.c.b16 %v6498, %v6497
  %v6599 = vpack.c.b16 %v6500, %v6499
  %v6600 = vpack.c.b16 %v6502, %v6501
  %v6601 = vpack.c.b16 %v6504, %v6503
  %v6602 = vpack.c.b16 %v6506, %v6505
  %v6603 = vpack.c.b16 %v6508, %v6507
  %v6604 = vpack.c.b16 %v6510, %v6509
  %v6605 = vpack.c.b16 %v6512, %v6511
  %v6606 = vpack.c.b16 %v6514, %v6513
  %v6607 = vpack.c.b16 %v6516, %v6515
  %v6608 = vpack.c.b16 %v6518, %v6517
  %v6609 = vpack.c.b16 %v6520, %v6519
  %v6610 = vpack.c.b16 %v6522, %v6521
  %v6611 = vpack.c.b16 %v6524, %v6523
  %v6612 = vpack.c.b16 %v6526, %v6525
  %v6613 = vpack.c.b16 %v6528, %v6527
  %v6614 = vpack.c.b16 %v6530, %v6529
  %v6615 = vpack.c.b16 %v6532, %v6531
  %v6616 = vpack.c.b16 %v6534, %v6533
  %v6617 = vpack.c.b16 %v6536, %v6535
  %v6618 = vpack.c.b16 %v6538, %v6537
  %v6619 = vpack.c.b16 %v6540, %v6539
  %v6620 = vpack.c.b16 %v6542, %v6541
  %v6621 = vpack.c.b16 %v6544, %v6543
  %v6622 = vpack.c.b16 %v6546, %v6545
  %v6623 = vpack.c.b16 %v6548, %v6547
  %v6624 = vpack.c.b16 %v6550, %v6549
  %v6625 = vpack.c.b16 %v6552, %v6551
  %v6626 = vpack.c.b16 %v6554, %v6553
  %v6627 = vpack.c.b16 %v6556, %v6555
  %v6628 = vpack.c.b16 %v6558, %v6557
  %v6629 = vpack.c.b16 %v6560, %v6559
  %v6630 = vpack.c.b16 %v6562, %v6561
  %v6631 = vpack.c.b16 %v6564, %v6563
  %v6632 = vpack.c.b16 %v6566, %v6565
  %v6633 = vpack.c.b16 %v6568, %v6567
  %v6634 = vpack.c.b16 %v6570, %v6569
  %v6639 = vunpack.c.l.b16 %v6311
  %v6640 = vunpack.c.l.b16 %v6312
  %v6641 = vunpack.c.l.b16 %v6313
  %v6642 = vunpack.c.l.b16 %v6314
  %v6643 = vpack.c.b16 %v6640, %v6639
  %v6644 = vpack.c.b16 %v6642, %v6641
  %v6648 = vsel %vm621, %v6571, 0
  %v6651 = vsel %vm621, %v6572, 0
  %v6654 = vsel %vm621, %v6573, 0
  %v6657 = vsel %vm621, %v6574, 0
  %v6660 = vsel %vm621, %v6575, 0
  %v6663 = vsel %vm621, %v6576, 0
  %v6666 = vsel %vm621, %v6577, 0
  %v6669 = vsel %vm621, %v6578, 0
  %v6672 = vsel %vm621, %v6579, 0
  %v6675 = vsel %vm621, %v6580, 0
  %v6678 = vsel %vm621, %v6581, 0
  %v6681 = vsel %vm621, %v6582, 0
  %v6684 = vsel %vm621, %v6583, 0
  %v6687 = vsel %vm621, %v6584, 0
  %v6690 = vsel %vm621, %v6585, 0
  %v6693 = vsel %vm621, %v6586, 0
  %v6696 = vsel %vm621, %v6587, 0
  %v6699 = vsel %vm621, %v6588, 0
  %v6702 = vsel %vm621, %v6589, 0
  %v6705 = vsel %vm621, %v6590, 0
  %v6708 = vsel %vm621, %v6591, 0
  %v6711 = vsel %vm621, %v6592, 0
  %v6714 = vsel %vm621, %v6593, 0
  %v6717 = vsel %vm621, %v6594, 0
  %v6720 = vsel %vm621, %v6595, 0
  %v6723 = vsel %vm621, %v6596, 0
  %v6726 = vsel %vm621, %v6597, 0
  %v6729 = vsel %vm621, %v6598, 0
  %v6732 = vsel %vm621, %v6599, 0
  %v6735 = vsel %vm621, %v6600, 0
  %v6738 = vsel %vm621, %v6601, 0
  %v6741 = vsel %vm621, %v6602, 0
  %v6744 = vsel %vm621, %v6603, 0
  %v6747 = vsel %vm621, %v6604, 0
  %v6750 = vsel %vm621, %v6605, 0
  %v6753 = vsel %vm621, %v6606, 0
  %v6756 = vsel %vm621, %v6607, 0
  %v6759 = vsel %vm621, %v6608, 0
  %v6762 = vsel %vm621, %v6609, 0
  %v6765 = vsel %vm621, %v6610, 0
  %v6768 = vsel %vm621, %v6611, 0
  %v6771 = vsel %vm621, %v6612, 0
  %v6774 = vsel %vm621, %v6613, 0
  %v6777 = vsel %vm621, %v6614, 0
  %v6780 = vsel %vm621, %v6615, 0
  %v6783 = vsel %vm621, %v6616, 0
  %v6786 = vsel %vm621, %v6617, 0
  %v6789 = vsel %vm621, %v6618, 0
  %v6792 = vsel %vm621, %v6619, 0
  %v6795 = vsel %vm621, %v6620, 0
  %v6798 = vsel %vm621, %v6621, 0
  %v6801 = vsel %vm621, %v6622, 0
  %v6804 = vsel %vm621, %v6623, 0
  %v6807 = vsel %vm621, %v6624, 0
  %v6810 = vsel %vm621, %v6625, 0
  %v6813 = vsel %vm621, %v6626, 0
  %v6816 = vsel %vm621, %v6627, 0
  %v6819 = vsel %vm621, %v6628, 0
  %v6822 = vsel %vm621, %v6629, 0
  %v6825 = vsel %vm621, %v6630, 0
  %v6828 = vsel %vm621, %v6631, 0
  %v6831 = vsel %vm621, %v6632, 0
  %v6834 = vsel %vm621, %v6633, 0
  %v6837 = vsel %vm621, %v6634, 0
  %6839 = vmatprep.subr.bf16.mxu0 0
  %6840 = vmatpush1.bf16.msra.mxu0 0
  %6841 = vmatprep.subr.bf16.mxu0 0
  %6842 = vmatpush1.bf16.msra.mxu0 0
  %6843 = vmatprep.subr.bf16.mxu0 0
  %6844 = vmatpush1.bf16.msra.mxu0 0
  %6845 = vmatprep.subr.bf16.mxu0 0
  %6846 = vmatpush1.bf16.msra.mxu0 0
  %6847 = vmatprep.subr.bf16.mxu0 0
  %6848 = vmatpush1.bf16.msra.mxu0 0
  %6849 = vmatprep.subr.bf16.mxu0 0
  %6850 = vmatpush1.bf16.msra.mxu0 0
  %6851 = vmatprep.subr.bf16.mxu0 0
  %6852 = vmatpush1.bf16.msra.mxu0 %v6644
  %6853 = vmatprep.subr.bf16.mxu0 0
  %6854 = vmatpush1.bf16.msra.mxu0 %v6643
  %6855 = vmatprep.subr.bf16.mxu0 0
  %6856 = vmatpush2.bf16.msra.mxu0 0
  %6857 = vmatprep.subr.bf16.mxu0 0
  %6858 = vmatpush2.bf16.msra.mxu0 0
  %6859 = vmatprep.subr.bf16.mxu0 0
  %6860 = vmatpush2.bf16.msra.mxu0 0
  %6861 = vmatprep.subr.bf16.mxu0 0
  %6862 = vmatpush2.bf16.msra.mxu0 0
  %6863 = vmatprep.subr.bf16.mxu0 0
  %6864 = vmatpush2.bf16.msra.mxu0 0
  %6865 = vmatprep.subr.bf16.mxu0 0
  %6866 = vmatpush2.bf16.msra.mxu0 0
  %6867 = vmatprep.subr.bf16.mxu0 0
  %6868 = vmatpush2.bf16.msra.mxu0 0
  %6869 = vmatprep.subr.bf16.mxu0 0
  %6870 = vmatpush2.bf16.msra.mxu0 0
  %6871 = vmatprep.mubr.bf16.mxu0 0
  %6872 = vmatmul.mubr.bf16.gmra.mxu0 %v6648
  %v6873 = vpop.f32.mrf.mxu0
  %v6874 = vadd.f32 0.0, %v6873
  %v6875 = vpop.f32.mrf.mxu0
  %v6876 = vpop.f32.mrf.mxu0
  %v6877 = vadd.f32 0.0, %v6876
  %v6878 = vpop.f32.mrf.mxu0
  %6879 = vmatprep.mubr.bf16.mxu0 0
  %6880 = vmatmul.mubr.bf16.gmra.mxu0 %v6651
  %v6881 = vpop.f32.mrf.mxu0
  %v6882 = vadd.f32 0.0, %v6881
  %v6883 = vpop.f32.mrf.mxu0
  %v6884 = vpop.f32.mrf.mxu0
  %v6885 = vadd.f32 0.0, %v6884
  %v6886 = vpop.f32.mrf.mxu0
  %6887 = vmatprep.mubr.bf16.mxu0 0
  %6888 = vmatmul.mubr.bf16.gmra.mxu0 %v6654
  %v6889 = vpop.f32.mrf.mxu0
  %v6890 = vadd.f32 0.0, %v6889
  %v6891 = vpop.f32.mrf.mxu0
  %v6892 = vpop.f32.mrf.mxu0
  %v6893 = vadd.f32 0.0, %v6892
  %v6894 = vpop.f32.mrf.mxu0
  %6895 = vmatprep.mubr.bf16.mxu0 0
  %6896 = vmatmul.mubr.bf16.gmra.mxu0 %v6657
  %v6897 = vpop.f32.mrf.mxu0
  %v6898 = vadd.f32 0.0, %v6897
  %v6899 = vpop.f32.mrf.mxu0
  %v6900 = vpop.f32.mrf.mxu0
  %v6901 = vadd.f32 0.0, %v6900
  %v6902 = vpop.f32.mrf.mxu0
  %6903 = vmatprep.mubr.bf16.mxu0 0
  %6904 = vmatmul.mubr.bf16.gmra.mxu0 %v6660
  %v6905 = vpop.f32.mrf.mxu0
  %v6906 = vadd.f32 0.0, %v6905
  %v6907 = vpop.f32.mrf.mxu0
  %v6908 = vpop.f32.mrf.mxu0
  %v6909 = vadd.f32 0.0, %v6908
  %v6910 = vpop.f32.mrf.mxu0
  %6911 = vmatprep.mubr.bf16.mxu0 0
  %6912 = vmatmul.mubr.bf16.gmra.mxu0 %v6663
  %v6913 = vpop.f32.mrf.mxu0
  %v6914 = vadd.f32 0.0, %v6913
  %v6915 = vpop.f32.mrf.mxu0
  %v6916 = vpop.f32.mrf.mxu0
  %v6917 = vadd.f32 0.0, %v6916
  %v6918 = vpop.f32.mrf.mxu0
  %6919 = vmatprep.mubr.bf16.mxu0 0
  %6920 = vmatmul.mubr.bf16.gmra.mxu0 %v6666
  %v6921 = vpop.f32.mrf.mxu0
  %v6922 = vadd.f32 0.0, %v6921
  %v6923 = vpop.f32.mrf.mxu0
  %v6924 = vpop.f32.mrf.mxu0
  %v6925 = vadd.f32 0.0, %v6924
  %v6926 = vpop.f32.mrf.mxu0
  %6927 = vmatprep.mubr.bf16.mxu0 0
  %6928 = vmatmul.mubr.bf16.gmra.mxu0 %v6669
  %v6929 = vpop.f32.mrf.mxu0
  %v6930 = vpop.f32.mrf.mxu0
  %v6931 = vpop.f32.mrf.mxu0
  %v6932 = vpop.f32.mrf.mxu0
  %6933 = vmatprep.mubr.bf16.mxu0 0
  %6934 = vmatmul.mubr.bf16.gmra.mxu0 %v6672
  %v6935 = vpop.f32.mrf.mxu0
  %v6936 = vpop.f32.mrf.mxu0
  %v6937 = vpop.f32.mrf.mxu0
  %v6938 = vpop.f32.mrf.mxu0
  %6939 = vmatprep.mubr.bf16.mxu0 0
  %6940 = vmatmul.mubr.bf16.gmra.mxu0 %v6675
  %v6941 = vpop.f32.mrf.mxu0
  %v6942 = vadd.f32 0.0, %v6941
  %v6943 = vpop.f32.mrf.mxu0
  %v6944 = vpop.f32.mrf.mxu0
  %v6945 = vadd.f32 0.0, %v6944
  %v6946 = vpop.f32.mrf.mxu0
  %6947 = vmatprep.mubr.bf16.mxu0 0
  %6948 = vmatmul.mubr.bf16.gmra.mxu0 %v6678
  %v6949 = vpop.f32.mrf.mxu0
  %v6950 = vadd.f32 0.0, %v6949
  %v6951 = vpop.f32.mrf.mxu0
  %v6952 = vpop.f32.mrf.mxu0
  %v6953 = vadd.f32 0.0, %v6952
  %v6954 = vpop.f32.mrf.mxu0
  %6955 = vmatprep.mubr.bf16.mxu0 0
  %6956 = vmatmul.mubr.bf16.gmra.mxu0 %v6681
  %v6957 = vpop.f32.mrf.mxu0
  %v6958 = vadd.f32 0.0, %v6957
  %v6959 = vpop.f32.mrf.mxu0
  %v6960 = vpop.f32.mrf.mxu0
  %v6961 = vadd.f32 0.0, %v6960
  %v6962 = vpop.f32.mrf.mxu0
  %6963 = vmatprep.mubr.bf16.mxu0 0
  %6964 = vmatmul.mubr.bf16.gmra.mxu0 %v6684
  %v6965 = vpop.f32.mrf.mxu0
  %v6966 = vadd.f32 0.0, %v6965
  %v6967 = vpop.f32.mrf.mxu0
  %v6968 = vpop.f32.mrf.mxu0
  %v6969 = vadd.f32 0.0, %v6968
  %v6970 = vpop.f32.mrf.mxu0
  %6971 = vmatprep.mubr.bf16.mxu0 0
  %6972 = vmatmul.mubr.bf16.gmra.mxu0 %v6687
  %v6973 = vpop.f32.mrf.mxu0
  %v6974 = vadd.f32 0.0, %v6973
  %v6975 = vpop.f32.mrf.mxu0
  %v6976 = vpop.f32.mrf.mxu0
  %v6977 = vadd.f32 0.0, %v6976
  %v6978 = vpop.f32.mrf.mxu0
  %6979 = vmatprep.mubr.bf16.mxu0 0
  %6980 = vmatmul.mubr.bf16.gmra.mxu0 %v6690
  %v6981 = vpop.f32.mrf.mxu0
  %v6982 = vadd.f32 0.0, %v6981
  %v6983 = vpop.f32.mrf.mxu0
  %v6984 = vpop.f32.mrf.mxu0
  %v6985 = vadd.f32 0.0, %v6984
  %v6986 = vpop.f32.mrf.mxu0
  %6987 = vmatprep.mubr.bf16.mxu0 0
  %6988 = vmatmul.mubr.bf16.gmra.mxu0 %v6693
  %v6989 = vpop.f32.mrf.mxu0
  %v6990 = vadd.f32 0.0, %v6989
  %v6991 = vpop.f32.mrf.mxu0
  %v6992 = vpop.f32.mrf.mxu0
  %v6993 = vadd.f32 0.0, %v6992
  %v6994 = vpop.f32.mrf.mxu0
  %6995 = vmatprep.mubr.bf16.mxu0 0
  %6996 = vmatmul.mubr.bf16.gmra.mxu0 %v6696
  %v6997 = vpop.f32.mrf.mxu0
  %v6998 = vpop.f32.mrf.mxu0
  %v6999 = vpop.f32.mrf.mxu0
  %v7000 = vpop.f32.mrf.mxu0
  %7001 = vmatprep.mubr.bf16.mxu0 0
  %7002 = vmatmul.mubr.bf16.gmra.mxu0 %v6699
  %v7003 = vpop.f32.mrf.mxu0
  %v7004 = vpop.f32.mrf.mxu0
  %v7005 = vpop.f32.mrf.mxu0
  %v7006 = vpop.f32.mrf.mxu0
  %7007 = vmatprep.mubr.bf16.mxu0 0
  %7008 = vmatmul.mubr.bf16.gmra.mxu0 %v6702
  %v7009 = vpop.f32.mrf.mxu0
  %v7010 = vadd.f32 0.0, %v7009
  %v7011 = vpop.f32.mrf.mxu0
  %v7012 = vpop.f32.mrf.mxu0
  %v7013 = vadd.f32 0.0, %v7012
  %v7014 = vpop.f32.mrf.mxu0
  %7015 = vmatprep.mubr.bf16.mxu0 0
  %7016 = vmatmul.mubr.bf16.gmra.mxu0 %v6705
  %v7017 = vpop.f32.mrf.mxu0
  %v7018 = vadd.f32 0.0, %v7017
  %v7019 = vpop.f32.mrf.mxu0
  %v7020 = vpop.f32.mrf.mxu0
  %v7021 = vadd.f32 0.0, %v7020
  %v7022 = vpop.f32.mrf.mxu0
  %7023 = vmatprep.mubr.bf16.mxu0 0
  %7024 = vmatmul.mubr.bf16.gmra.mxu0 %v6708
  %v7025 = vpop.f32.mrf.mxu0
  %v7026 = vadd.f32 0.0, %v7025
  %v7027 = vpop.f32.mrf.mxu0
  %v7028 = vpop.f32.mrf.mxu0
  %v7029 = vadd.f32 0.0, %v7028
  %v7030 = vpop.f32.mrf.mxu0
  %7031 = vmatprep.mubr.bf16.mxu0 0
  %7032 = vmatmul.mubr.bf16.gmra.mxu0 %v6711
  %v7033 = vpop.f32.mrf.mxu0
  %v7034 = vadd.f32 0.0, %v7033
  %v7035 = vpop.f32.mrf.mxu0
  %v7036 = vpop.f32.mrf.mxu0
  %v7037 = vadd.f32 0.0, %v7036
  %v7038 = vpop.f32.mrf.mxu0
  %7039 = vmatprep.mubr.bf16.mxu0 0
  %7040 = vmatmul.mubr.bf16.gmra.mxu0 %v6714
  %v7041 = vpop.f32.mrf.mxu0
  %v7042 = vadd.f32 0.0, %v7041
  %v7043 = vpop.f32.mrf.mxu0
  %v7044 = vpop.f32.mrf.mxu0
  %v7045 = vadd.f32 0.0, %v7044
  %v7046 = vpop.f32.mrf.mxu0
  %7047 = vmatprep.mubr.bf16.mxu0 0
  %7048 = vmatmul.mubr.bf16.gmra.mxu0 %v6717
  %v7049 = vpop.f32.mrf.mxu0
  %v7050 = vadd.f32 0.0, %v7049
  %v7051 = vpop.f32.mrf.mxu0
  %v7052 = vpop.f32.mrf.mxu0
  %v7053 = vadd.f32 0.0, %v7052
  %v7054 = vpop.f32.mrf.mxu0
  %7055 = vmatprep.mubr.bf16.mxu0 0
  %7056 = vmatmul.mubr.bf16.gmra.mxu0 %v6720
  %v7057 = vpop.f32.mrf.mxu0
  %v7058 = vadd.f32 0.0, %v7057
  %v7059 = vpop.f32.mrf.mxu0
  %v7060 = vpop.f32.mrf.mxu0
  %v7061 = vadd.f32 0.0, %v7060
  %v7062 = vpop.f32.mrf.mxu0
  %7063 = vmatprep.mubr.bf16.mxu0 0
  %7064 = vmatmul.mubr.bf16.gmra.mxu0 %v6723
  %v7065 = vpop.f32.mrf.mxu0
  %v7066 = vpop.f32.mrf.mxu0
  %v7067 = vpop.f32.mrf.mxu0
  %v7068 = vpop.f32.mrf.mxu0
  %7069 = vmatprep.mubr.bf16.mxu0 0
  %7070 = vmatmul.mubr.bf16.gmra.mxu0 %v6726
  %v7071 = vpop.f32.mrf.mxu0
  %v7072 = vpop.f32.mrf.mxu0
  %v7073 = vpop.f32.mrf.mxu0
  %v7074 = vpop.f32.mrf.mxu0
  %7075 = vmatprep.mubr.bf16.mxu0 0
  %7076 = vmatmul.mubr.bf16.gmra.mxu0 %v6729
  %v7077 = vpop.f32.mrf.mxu0
  %v7078 = vadd.f32 0.0, %v7077
  %v7079 = vpop.f32.mrf.mxu0
  %v7080 = vpop.f32.mrf.mxu0
  %v7081 = vadd.f32 0.0, %v7080
  %v7082 = vpop.f32.mrf.mxu0
  %7083 = vmatprep.mubr.bf16.mxu0 0
  %7084 = vmatmul.mubr.bf16.gmra.mxu0 %v6732
  %v7085 = vpop.f32.mrf.mxu0
  %v7086 = vadd.f32 0.0, %v7085
  %v7087 = vpop.f32.mrf.mxu0
  %v7088 = vpop.f32.mrf.mxu0
  %v7089 = vadd.f32 0.0, %v7088
  %v7090 = vpop.f32.mrf.mxu0
  %7091 = vmatprep.mubr.bf16.mxu0 0
  %7092 = vmatmul.mubr.bf16.gmra.mxu0 %v6735
  %v7093 = vpop.f32.mrf.mxu0
  %v7094 = vadd.f32 0.0, %v7093
  %v7095 = vpop.f32.mrf.mxu0
  %v7096 = vpop.f32.mrf.mxu0
  %v7097 = vadd.f32 0.0, %v7096
  %v7098 = vpop.f32.mrf.mxu0
  %7099 = vmatprep.mubr.bf16.mxu0 0
  %7100 = vmatmul.mubr.bf16.gmra.mxu0 %v6738
  %v7101 = vpop.f32.mrf.mxu0
  %v7102 = vadd.f32 0.0, %v7101
  %v7103 = vpop.f32.mrf.mxu0
  %v7104 = vpop.f32.mrf.mxu0
  %v7105 = vadd.f32 0.0, %v7104
  %v7106 = vpop.f32.mrf.mxu0
  %7107 = vmatprep.mubr.bf16.mxu0 0
  %7108 = vmatmul.mubr.bf16.gmra.mxu0 %v6741
  %v7109 = vpop.f32.mrf.mxu0
  %v7110 = vadd.f32 0.0, %v7109
  %v7111 = vpop.f32.mrf.mxu0
  %v7112 = vpop.f32.mrf.mxu0
  %v7113 = vadd.f32 0.0, %v7112
  %v7114 = vpop.f32.mrf.mxu0
  %7115 = vmatprep.mubr.bf16.mxu0 0
  %7116 = vmatmul.mubr.bf16.gmra.mxu0 %v6744
  %v7117 = vpop.f32.mrf.mxu0
  %v7118 = vadd.f32 0.0, %v7117
  %v7119 = vpop.f32.mrf.mxu0
  %v7120 = vpop.f32.mrf.mxu0
  %v7121 = vadd.f32 0.0, %v7120
  %v7122 = vpop.f32.mrf.mxu0
  %7123 = vmatprep.mubr.bf16.mxu0 0
  %7124 = vmatmul.mubr.bf16.gmra.mxu0 %v6747
  %v7125 = vpop.f32.mrf.mxu0
  %v7126 = vadd.f32 0.0, %v7125
  %v7127 = vpop.f32.mrf.mxu0
  %v7128 = vpop.f32.mrf.mxu0
  %v7129 = vadd.f32 0.0, %v7128
  %v7130 = vpop.f32.mrf.mxu0
  %7131 = vmatprep.mubr.bf16.mxu0 0
  %7132 = vmatmul.mubr.bf16.gmra.mxu0 %v6750
  %v7133 = vpop.f32.mrf.mxu0
  %v7134 = vpop.f32.mrf.mxu0
  %v7135 = vpop.f32.mrf.mxu0
  %v7136 = vpop.f32.mrf.mxu0
  %7137 = vmatprep.mubr.bf16.mxu0 0
  %7138 = vmatmul.mubr.bf16.gmra.mxu0 %v6753
  %v7139 = vpop.f32.mrf.mxu0
  %v7140 = vpop.f32.mrf.mxu0
  %v7141 = vpop.f32.mrf.mxu0
  %v7142 = vpop.f32.mrf.mxu0
  %7143 = vmatprep.mubr.bf16.mxu0 0
  %7144 = vmatmul.mubr.bf16.gmra.mxu0 %v6756
  %v7145 = vpop.f32.mrf.mxu0
  %v7146 = vadd.f32 0.0, %v7145
  %v7147 = vpop.f32.mrf.mxu0
  %v7148 = vpop.f32.mrf.mxu0
  %v7149 = vadd.f32 0.0, %v7148
  %v7150 = vpop.f32.mrf.mxu0
  %7151 = vmatprep.mubr.bf16.mxu0 0
  %7152 = vmatmul.mubr.bf16.gmra.mxu0 %v6759
  %v7153 = vpop.f32.mrf.mxu0
  %v7154 = vadd.f32 0.0, %v7153
  %v7155 = vpop.f32.mrf.mxu0
  %v7156 = vpop.f32.mrf.mxu0
  %v7157 = vadd.f32 0.0, %v7156
  %v7158 = vpop.f32.mrf.mxu0
  %7159 = vmatprep.mubr.bf16.mxu0 0
  %7160 = vmatmul.mubr.bf16.gmra.mxu0 %v6762
  %v7161 = vpop.f32.mrf.mxu0
  %v7162 = vadd.f32 0.0, %v7161
  %v7163 = vpop.f32.mrf.mxu0
  %v7164 = vpop.f32.mrf.mxu0
  %v7165 = vadd.f32 0.0, %v7164
  %v7166 = vpop.f32.mrf.mxu0
  %7167 = vmatprep.mubr.bf16.mxu0 0
  %7168 = vmatmul.mubr.bf16.gmra.mxu0 %v6765
  %v7169 = vpop.f32.mrf.mxu0
  %v7170 = vadd.f32 0.0, %v7169
  %v7171 = vpop.f32.mrf.mxu0
  %v7172 = vpop.f32.mrf.mxu0
  %v7173 = vadd.f32 0.0, %v7172
  %v7174 = vpop.f32.mrf.mxu0
  %7175 = vmatprep.mubr.bf16.mxu0 0
  %7176 = vmatmul.mubr.bf16.gmra.mxu0 %v6768
  %v7177 = vpop.f32.mrf.mxu0
  %v7178 = vadd.f32 0.0, %v7177
  %v7179 = vpop.f32.mrf.mxu0
  %v7180 = vpop.f32.mrf.mxu0
  %v7181 = vadd.f32 0.0, %v7180
  %v7182 = vpop.f32.mrf.mxu0
  %7183 = vmatprep.mubr.bf16.mxu0 0
  %7184 = vmatmul.mubr.bf16.gmra.mxu0 %v6771
  %v7185 = vpop.f32.mrf.mxu0
  %v7186 = vadd.f32 0.0, %v7185
  %v7187 = vpop.f32.mrf.mxu0
  %v7188 = vpop.f32.mrf.mxu0
  %v7189 = vadd.f32 0.0, %v7188
  %v7190 = vpop.f32.mrf.mxu0
  %7191 = vmatprep.mubr.bf16.mxu0 0
  %7192 = vmatmul.mubr.bf16.gmra.mxu0 %v6774
  %v7193 = vpop.f32.mrf.mxu0
  %v7194 = vadd.f32 0.0, %v7193
  %v7195 = vpop.f32.mrf.mxu0
  %v7196 = vpop.f32.mrf.mxu0
  %v7197 = vadd.f32 0.0, %v7196
  %v7198 = vpop.f32.mrf.mxu0
  %7199 = vmatprep.mubr.bf16.mxu0 0
  %7200 = vmatmul.mubr.bf16.gmra.mxu0 %v6777
  %v7201 = vpop.f32.mrf.mxu0
  %v7202 = vpop.f32.mrf.mxu0
  %v7203 = vpop.f32.mrf.mxu0
  %v7204 = vpop.f32.mrf.mxu0
  %7205 = vmatprep.mubr.bf16.mxu0 0
  %7206 = vmatmul.mubr.bf16.gmra.mxu0 %v6780
  %v7207 = vpop.f32.mrf.mxu0
  %v7208 = vpop.f32.mrf.mxu0
  %v7209 = vpop.f32.mrf.mxu0
  %v7210 = vpop.f32.mrf.mxu0
  %7211 = vmatprep.mubr.bf16.mxu0 0
  %7212 = vmatmul.mubr.bf16.gmra.mxu0 %v6783
  %v7213 = vpop.f32.mrf.mxu0
  %v7214 = vadd.f32 0.0, %v7213
  %v7215 = vpop.f32.mrf.mxu0
  %v7216 = vpop.f32.mrf.mxu0
  %v7217 = vadd.f32 0.0, %v7216
  %v7218 = vpop.f32.mrf.mxu0
  %7219 = vmatprep.mubr.bf16.mxu0 0
  %7220 = vmatmul.mubr.bf16.gmra.mxu0 %v6786
  %v7221 = vpop.f32.mrf.mxu0
  %v7222 = vadd.f32 0.0, %v7221
  %v7223 = vpop.f32.mrf.mxu0
  %v7224 = vpop.f32.mrf.mxu0
  %v7225 = vadd.f32 0.0, %v7224
  %v7226 = vpop.f32.mrf.mxu0
  %7227 = vmatprep.mubr.bf16.mxu0 0
  %7228 = vmatmul.mubr.bf16.gmra.mxu0 %v6789
  %v7229 = vpop.f32.mrf.mxu0
  %v7230 = vadd.f32 0.0, %v7229
  %v7231 = vpop.f32.mrf.mxu0
  %v7232 = vpop.f32.mrf.mxu0
  %v7233 = vadd.f32 0.0, %v7232
  %v7234 = vpop.f32.mrf.mxu0
  %7235 = vmatprep.mubr.bf16.mxu0 0
  %7236 = vmatmul.mubr.bf16.gmra.mxu0 %v6792
  %v7237 = vpop.f32.mrf.mxu0
  %v7238 = vadd.f32 0.0, %v7237
  %v7239 = vpop.f32.mrf.mxu0
  %v7240 = vpop.f32.mrf.mxu0
  %v7241 = vadd.f32 0.0, %v7240
  %v7242 = vpop.f32.mrf.mxu0
  %7243 = vmatprep.mubr.bf16.mxu0 0
  %7244 = vmatmul.mubr.bf16.gmra.mxu0 %v6795
  %v7245 = vpop.f32.mrf.mxu0
  %v7246 = vadd.f32 0.0, %v7245
  %v7247 = vpop.f32.mrf.mxu0
  %v7248 = vpop.f32.mrf.mxu0
  %v7249 = vadd.f32 0.0, %v7248
  %v7250 = vpop.f32.mrf.mxu0
  %7251 = vmatprep.mubr.bf16.mxu0 0
  %7252 = vmatmul.mubr.bf16.gmra.mxu0 %v6798
  %v7253 = vpop.f32.mrf.mxu0
  %v7254 = vadd.f32 0.0, %v7253
  %v7255 = vpop.f32.mrf.mxu0
  %v7256 = vpop.f32.mrf.mxu0
  %v7257 = vadd.f32 0.0, %v7256
  %v7258 = vpop.f32.mrf.mxu0
  %7259 = vmatprep.mubr.bf16.mxu0 0
  %7260 = vmatmul.mubr.bf16.gmra.mxu0 %v6801
  %v7261 = vpop.f32.mrf.mxu0
  %v7262 = vadd.f32 0.0, %v7261
  %v7263 = vpop.f32.mrf.mxu0
  %v7264 = vpop.f32.mrf.mxu0
  %v7265 = vadd.f32 0.0, %v7264
  %v7266 = vpop.f32.mrf.mxu0
  %7267 = vmatprep.mubr.bf16.mxu0 0
  %7268 = vmatmul.mubr.bf16.gmra.mxu0 %v6804
  %v7269 = vpop.f32.mrf.mxu0
  %v7270 = vpop.f32.mrf.mxu0
  %v7271 = vpop.f32.mrf.mxu0
  %v7272 = vpop.f32.mrf.mxu0
  %7273 = vmatprep.mubr.bf16.mxu0 0
  %7274 = vmatmul.mubr.bf16.gmra.mxu0 %v6807
  %v7275 = vpop.f32.mrf.mxu0
  %v7276 = vpop.f32.mrf.mxu0
  %v7277 = vpop.f32.mrf.mxu0
  %v7278 = vpop.f32.mrf.mxu0
  %7279 = vmatprep.mubr.bf16.mxu0 0
  %7280 = vmatmul.mubr.bf16.gmra.mxu0 %v6810
  %v7281 = vpop.f32.mrf.mxu0
  %v7282 = vadd.f32 0.0, %v7281
  %v7283 = vpop.f32.mrf.mxu0
  %v7284 = vpop.f32.mrf.mxu0
  %v7285 = vadd.f32 0.0, %v7284
  %v7286 = vpop.f32.mrf.mxu0
  %7287 = vmatprep.mubr.bf16.mxu0 0
  %7288 = vmatmul.mubr.bf16.gmra.mxu0 %v6813
  %v7289 = vpop.f32.mrf.mxu0
  %v7290 = vadd.f32 0.0, %v7289
  %v7291 = vpop.f32.mrf.mxu0
  %v7292 = vpop.f32.mrf.mxu0
  %v7293 = vadd.f32 0.0, %v7292
  %v7294 = vpop.f32.mrf.mxu0
  %7295 = vmatprep.mubr.bf16.mxu0 0
  %7296 = vmatmul.mubr.bf16.gmra.mxu0 %v6816
  %v7297 = vpop.f32.mrf.mxu0
  %v7298 = vadd.f32 0.0, %v7297
  %v7299 = vpop.f32.mrf.mxu0
  %v7300 = vpop.f32.mrf.mxu0
  %v7301 = vadd.f32 0.0, %v7300
  %v7302 = vpop.f32.mrf.mxu0
  %7303 = vmatprep.mubr.bf16.mxu0 0
  %7304 = vmatmul.mubr.bf16.gmra.mxu0 %v6819
  %v7305 = vpop.f32.mrf.mxu0
  %v7306 = vadd.f32 0.0, %v7305
  %v7307 = vpop.f32.mrf.mxu0
  %v7308 = vpop.f32.mrf.mxu0
  %v7309 = vadd.f32 0.0, %v7308
  %v7310 = vpop.f32.mrf.mxu0
  %7311 = vmatprep.mubr.bf16.mxu0 0
  %7312 = vmatmul.mubr.bf16.gmra.mxu0 %v6822
  %v7313 = vpop.f32.mrf.mxu0
  %v7314 = vadd.f32 0.0, %v7313
  %v7315 = vpop.f32.mrf.mxu0
  %v7316 = vpop.f32.mrf.mxu0
  %v7317 = vadd.f32 0.0, %v7316
  %v7318 = vpop.f32.mrf.mxu0
  %7319 = vmatprep.mubr.bf16.mxu0 0
  %7320 = vmatmul.mubr.bf16.gmra.mxu0 %v6825
  %v7321 = vpop.f32.mrf.mxu0
  %v7322 = vadd.f32 0.0, %v7321
  %v7323 = vpop.f32.mrf.mxu0
  %v7324 = vpop.f32.mrf.mxu0
  %v7325 = vadd.f32 0.0, %v7324
  %v7326 = vpop.f32.mrf.mxu0
  %7327 = vmatprep.mubr.bf16.mxu0 0
  %7328 = vmatmul.mubr.bf16.gmra.mxu0 %v6828
  %v7329 = vpop.f32.mrf.mxu0
  %v7330 = vadd.f32 0.0, %v7329
  %v7331 = vpop.f32.mrf.mxu0
  %v7332 = vpop.f32.mrf.mxu0
  %v7333 = vadd.f32 0.0, %v7332
  %v7334 = vpop.f32.mrf.mxu0
  %7335 = vmatprep.mubr.bf16.mxu0 0
  %7336 = vmatmul.mubr.bf16.gmra.mxu0 %v6831
  %v7337 = vpop.f32.mrf.mxu0
  %v7338 = vpop.f32.mrf.mxu0
  %v7339 = vpop.f32.mrf.mxu0
  %v7340 = vpop.f32.mrf.mxu0
  %7341 = vmatprep.mubr.bf16.mxu0 0
  %7342 = vmatmul.mubr.bf16.gmra.mxu0 %v6834
  %v7343 = vpop.f32.mrf.mxu0
  %v7344 = vpop.f32.mrf.mxu0
  %v7345 = vpop.f32.mrf.mxu0
  %v7346 = vpop.f32.mrf.mxu0
  %7347 = vmatprep.mubr.bf16.mxu0 0
  %7348 = vmatmul.mubr.bf16.gmra.mxu0 %v6837
  %v7349 = vpop.f32.mrf.mxu0
  %v7350 = vpop.f32.mrf.mxu0
  %v7351 = vpop.f32.mrf.mxu0
  %v7352 = vpop.f32.mrf.mxu0
  %7353 = vdwg.mxu0
  %v7354 = vadd.f32 %v6083, %v6874
  %v7355 = vadd.f32 %v6084, %v6877
  %v7356 = vadd.f32 %v6085, %v6882
  %v7357 = vadd.f32 %v6086, %v6885
  %v7358 = vadd.f32 %v6087, %v6890
  %v7359 = vadd.f32 %v6088, %v6893
  %v7360 = vadd.f32 %v6089, %v6898
  %v7361 = vadd.f32 %v6090, %v6901
  %v7362 = vadd.f32 %v6091, %v6906
  %v7363 = vadd.f32 %v6092, %v6909
  %v7364 = vadd.f32 %v6093, %v6914
  %v7365 = vadd.f32 %v6094, %v6917
  %v7366 = vadd.f32 %v6095, %v6922
  %v7367 = vadd.f32 %v6096, %v6925
  %v7368 = vadd.f32 %v6097, %v6942
  %v7369 = vadd.f32 %v6098, %v6945
  %v7370 = vadd.f32 %v6099, %v6950
  %v7371 = vadd.f32 %v6100, %v6953
  %v7372 = vadd.f32 %v6101, %v6958
  %v7373 = vadd.f32 %v6102, %v6961
  %v7374 = vadd.f32 %v6103, %v6966
  %v7375 = vadd.f32 %v6104, %v6969
  %v7376 = vadd.f32 %v6105, %v6974
  %v7377 = vadd.f32 %v6106, %v6977
  %v7378 = vadd.f32 %v6107, %v6982
  %v7379 = vadd.f32 %v6108, %v6985
  %v7380 = vadd.f32 %v6109, %v6990
  %v7381 = vadd.f32 %v6110, %v6993
  %v7382 = vadd.f32 %v6111, %v7010
  %v7383 = vadd.f32 %v6112, %v7013
  %v7384 = vadd.f32 %v6113, %v7018
  %v7385 = vadd.f32 %v6114, %v7021
  %v7386 = vadd.f32 %v6115, %v7026
  %v7387 = vadd.f32 %v6116, %v7029
  %v7388 = vadd.f32 %v6117, %v7034
  %v7389 = vadd.f32 %v6118, %v7037
  %v7390 = vadd.f32 %v6119, %v7042
  %v7391 = vadd.f32 %v6120, %v7045
  %v7392 = vadd.f32 %v6121, %v7050
  %v7393 = vadd.f32 %v6122, %v7053
  %v7394 = vadd.f32 %v6123, %v7058
  %v7395 = vadd.f32 %v6124, %v7061
  %v7396 = vadd.f32 %v6125, %v7078
  %v7397 = vadd.f32 %v6126, %v7081
  %v7398 = vadd.f32 %v6127, %v7086
  %v7399 = vadd.f32 %v6128, %v7089
  %v7400 = vadd.f32 %v6129, %v7094
  %v7401 = vadd.f32 %v6130, %v7097
  %v7402 = vadd.f32 %v6131, %v7102
  %v7403 = vadd.f32 %v6132, %v7105
  %v7404 = vadd.f32 %v6133, %v7110
  %v7405 = vadd.f32 %v6134, %v7113
  %v7406 = vadd.f32 %v6135, %v7118
  %v7407 = vadd.f32 %v6136, %v7121
  %v7408 = vadd.f32 %v6137, %v7126
  %v7409 = vadd.f32 %v6138, %v7129
  %v7410 = vadd.f32 %v6139, %v7146
  %v7411 = vadd.f32 %v6140, %v7149
  %v7412 = vadd.f32 %v6141, %v7154
  %v7413 = vadd.f32 %v6142, %v7157
  %v7414 = vadd.f32 %v6143, %v7162
  %v7415 = vadd.f32 %v6144, %v7165
  %v7416 = vadd.f32 %v6145, %v7170
  %v7417 = vadd.f32 %v6146, %v7173
  %v7418 = vadd.f32 %v6147, %v7178
  %v7419 = vadd.f32 %v6148, %v7181
  %v7420 = vadd.f32 %v6149, %v7186
  %v7421 = vadd.f32 %v6150, %v7189
  %v7422 = vadd.f32 %v6151, %v7194
  %v7423 = vadd.f32 %v6152, %v7197
  %v7424 = vadd.f32 %v6153, %v7214
  %v7425 = vadd.f32 %v6154, %v7217
  %v7426 = vadd.f32 %v6155, %v7222
  %v7427 = vadd.f32 %v6156, %v7225
  %v7428 = vadd.f32 %v6157, %v7230
  %v7429 = vadd.f32 %v6158, %v7233
  %v7430 = vadd.f32 %v6159, %v7238
  %v7431 = vadd.f32 %v6160, %v7241
  %v7432 = vadd.f32 %v6161, %v7246
  %v7433 = vadd.f32 %v6162, %v7249
  %v7434 = vadd.f32 %v6163, %v7254
  %v7435 = vadd.f32 %v6164, %v7257
  %v7436 = vadd.f32 %v6165, %v7262
  %v7437 = vadd.f32 %v6166, %v7265
  %v7438 = vadd.f32 %v6167, %v7282
  %v7439 = vadd.f32 %v6168, %v7285
  %v7440 = vadd.f32 %v6169, %v7290
  %v7441 = vadd.f32 %v6170, %v7293
  %v7442 = vadd.f32 %v6171, %v7298
  %v7443 = vadd.f32 %v6172, %v7301
  %v7444 = vadd.f32 %v6173, %v7306
  %v7445 = vadd.f32 %v6174, %v7309
  %v7446 = vadd.f32 %v6175, %v7314
  %v7447 = vadd.f32 %v6176, %v7317
  %v7448 = vadd.f32 %v6177, %v7322
  %v7449 = vadd.f32 %v6178, %v7325
  %v7450 = vadd.f32 %v6179, %v7330
  %v7451 = vadd.f32 %v6180, %v7333
  %s7452 = scalar_lea.vmem %s0, 144
  %v7453 = vld [vmem:[%s7452] sm:$0xf]
  %v7454 = vld [vmem:[%s7452 + $0x4] sm:$0xf]
  %v7455 = vld [vmem:[%s7452 + $0x8] sm:$0xf]
  %v7456 = vld [vmem:[%s7452 + $0xc] sm:$0xf]
  %v7457 = vld [vmem:[%s7452 + $0x10] sm:$0xf]
  %v7458 = vld [vmem:[%s7452 + $0x14] sm:$0xf]
  %v7459 = vld [vmem:[%s7452 + $0x18] sm:$0xf]
  %v7460 = vld [vmem:[%s7452 + $0x1c] sm:$0xf]
  %v7461 = vld [vmem:[%s7452 + $0x20] sm:$0xf]
  %v7462 = vld [vmem:[%s7452 + $0x24] sm:$0xf]
  %v7463 = vld [vmem:[%s7452 + $0x28] sm:$0xf]
  %v7464 = vld [vmem:[%s7452 + $0x2c] sm:$0xf]
  %v7465 = vld [vmem:[%s7452 + $0x30] sm:$0xf]
  %v7466 = vld [vmem:[%s7452 + $0x34] sm:$0xf]
  %v7467 = vld [vmem:[%s7452 + $0x38] sm:$0xf]
  %v7468 = vld [vmem:[%s7452 + $0x3c] sm:$0xf]
  %v7469 = vld [vmem:[%s7452 + $0x40] sm:$0xf]
  %v7470 = vld [vmem:[%s7452 + $0x44] sm:$0xf]
  %v7471 = vld [vmem:[%s7452 + $0x48] sm:$0xf]
  %v7472 = vld [vmem:[%s7452 + $0x4c] sm:$0xf]
  %v7473 = vld [vmem:[%s7452 + $0x50] sm:$0xf]
  %v7474 = vld [vmem:[%s7452 + $0x54] sm:$0xf]
  %v7475 = vld [vmem:[%s7452 + $0x58] sm:$0xf]
  %v7476 = vld [vmem:[%s7452 + $0x5c] sm:$0xf]
  %v7477 = vld [vmem:[%s7452 + $0x60] sm:$0xf]
  %v7478 = vld [vmem:[%s7452 + $0x64] sm:$0xf]
  %v7479 = vld [vmem:[%s7452 + $0x68] sm:$0xf]
  %v7480 = vld [vmem:[%s7452 + $0x6c] sm:$0xf]
  %v7481 = vld [vmem:[%s7452 + $0x70] sm:$0xf]
  %v7482 = vld [vmem:[%s7452 + $0x74] sm:$0xf]
  %v7483 = vld [vmem:[%s7452 + $0x78] sm:$0xf]
  %v7484 = vld [vmem:[%s7452 + $0x7c] sm:$0xf]
  %v7485 = vld [vmem:[%s7452 + $0x80] sm:$0xf]
  %v7486 = vld [vmem:[%s7452 + $0x84] sm:$0xf]
  %v7487 = vld [vmem:[%s7452 + $0x88] sm:$0xf]
  %v7488 = vld [vmem:[%s7452 + $0x8c] sm:$0xf]
  %v7489 = vld [vmem:[%s7452 + $0x90] sm:$0xf]
  %v7490 = vld [vmem:[%s7452 + $0x94] sm:$0xf]
  %v7491 = vld [vmem:[%s7452 + $0x98] sm:$0xf]
  %v7492 = vld [vmem:[%s7452 + $0x9c] sm:$0xf]
  %v7493 = vld [vmem:[%s7452 + $0xa0] sm:$0xf]
  %v7494 = vld [vmem:[%s7452 + $0xa4] sm:$0xf]
  %v7495 = vld [vmem:[%s7452 + $0xa8] sm:$0xf]
  %v7496 = vld [vmem:[%s7452 + $0xac] sm:$0xf]
  %v7497 = vld [vmem:[%s7452 + $0xb0] sm:$0xf]
  %v7498 = vld [vmem:[%s7452 + $0xb4] sm:$0xf]
  %v7499 = vld [vmem:[%s7452 + $0xb8] sm:$0xf]
  %v7500 = vld [vmem:[%s7452 + $0xbc] sm:$0xf]
  %v7501 = vld [vmem:[%s7452 + $0xc0] sm:$0xf]
  %v7502 = vld [vmem:[%s7452 + $0xc4] sm:$0xf]
  %v7503 = vld [vmem:[%s7452 + $0xc8] sm:$0xf]
  %v7504 = vld [vmem:[%s7452 + $0xcc] sm:$0xf]
  %v7505 = vld [vmem:[%s7452 + $0xd0] sm:$0xf]
  %v7506 = vld [vmem:[%s7452 + $0xd4] sm:$0xf]
  %v7507 = vld [vmem:[%s7452 + $0xd8] sm:$0xf]
  %v7508 = vld [vmem:[%s7452 + $0xdc] sm:$0xf]
  %v7509 = vld [vmem:[%s7452 + $0xe0] sm:$0xf]
  %v7510 = vld [vmem:[%s7452 + $0xe4] sm:$0xf]
  %v7511 = vld [vmem:[%s7452 + $0xe8] sm:$0xf]
  %v7512 = vld [vmem:[%s7452 + $0xec] sm:$0xf]
  %v7513 = vld [vmem:[%s7452 + $0xf0] sm:$0xf]
  %v7514 = vld [vmem:[%s7452 + $0xf4] sm:$0xf]
  %v7515 = vld [vmem:[%s7452 + $0xf8] sm:$0xf]
  %v7516 = vld [vmem:[%s7452 + $0xfc] sm:$0xf]
  %v7517 = vld [vmem:[%s7452 + $0x100] sm:$0xf]
  %v7518 = vld [vmem:[%s7452 + $0x104] sm:$0xf]
  %v7519 = vld [vmem:[%s7452 + $0x108] sm:$0xf]
  %v7520 = vld [vmem:[%s7452 + $0x10c] sm:$0xf]
  %v7521 = vld [vmem:[%s7452 + $0x110] sm:$0xf]
  %v7522 = vld [vmem:[%s7452 + $0x114] sm:$0xf]
  %v7523 = vld [vmem:[%s7452 + $0x118] sm:$0xf]
  %v7524 = vld [vmem:[%s7452 + $0x11c] sm:$0xf]
  %v7525 = vld [vmem:[%s7452 + $0x120] sm:$0xf]
  %v7526 = vld [vmem:[%s7452 + $0x124] sm:$0xf]
  %v7527 = vld [vmem:[%s7452 + $0x128] sm:$0xf]
  %v7528 = vld [vmem:[%s7452 + $0x12c] sm:$0xf]
  %v7529 = vld [vmem:[%s7452 + $0x130] sm:$0xf]
  %v7530 = vld [vmem:[%s7452 + $0x134] sm:$0xf]
  %v7531 = vld [vmem:[%s7452 + $0x138] sm:$0xf]
  %v7532 = vld [vmem:[%s7452 + $0x13c] sm:$0xf]
  %v7533 = vld [vmem:[%s7452 + $0x140] sm:$0xf]
  %v7534 = vld [vmem:[%s7452 + $0x144] sm:$0xf]
  %v7535 = vld [vmem:[%s7452 + $0x148] sm:$0xf]
  %v7536 = vld [vmem:[%s7452 + $0x14c] sm:$0xf]
  %v7537 = vld [vmem:[%s7452 + $0x150] sm:$0xf]
  %v7538 = vld [vmem:[%s7452 + $0x154] sm:$0xf]
  %v7539 = vld [vmem:[%s7452 + $0x158] sm:$0xf]
  %v7540 = vld [vmem:[%s7452 + $0x15c] sm:$0xf]
  %v7541 = vld [vmem:[%s7452 + $0x160] sm:$0xf]
  %v7542 = vld [vmem:[%s7452 + $0x164] sm:$0xf]
  %v7543 = vld [vmem:[%s7452 + $0x168] sm:$0xf]
  %v7544 = vld [vmem:[%s7452 + $0x16c] sm:$0xf]
  %v7545 = vld [vmem:[%s7452 + $0x170] sm:$0xf]
  %v7546 = vld [vmem:[%s7452 + $0x174] sm:$0xf]
  %v7547 = vld [vmem:[%s7452 + $0x178] sm:$0xf]
  %v7548 = vld [vmem:[%s7452 + $0x17c] sm:$0xf]
  %v7549 = vld [vmem:[%s7452 + $0x180] sm:$0xf]
  %v7550 = vld [vmem:[%s7452 + $0x184] sm:$0xf]
  %v7551 = vld [vmem:[%s7452 + $0x188] sm:$0xf]
  %v7552 = vld [vmem:[%s7452 + $0x18c] sm:$0xf]
  %v7553 = vld [vmem:[%s7452 + $0x190] sm:$0xf]
  %v7554 = vld [vmem:[%s7452 + $0x194] sm:$0xf]
  %v7555 = vld [vmem:[%s7452 + $0x198] sm:$0xf]
  %v7556 = vld [vmem:[%s7452 + $0x19c] sm:$0xf]
  %v7557 = vld [vmem:[%s7452 + $0x1a0] sm:$0xf]
  %v7558 = vld [vmem:[%s7452 + $0x1a4] sm:$0xf]
  %v7559 = vld [vmem:[%s7452 + $0x1a8] sm:$0xf]
  %v7560 = vld [vmem:[%s7452 + $0x1ac] sm:$0xf]
  %v7561 = vld [vmem:[%s7452 + $0x1b0] sm:$0xf]
  %v7562 = vld [vmem:[%s7452 + $0x1b4] sm:$0xf]
  %v7563 = vld [vmem:[%s7452 + $0x1b8] sm:$0xf]
  %v7564 = vld [vmem:[%s7452 + $0x1bc] sm:$0xf]
  %v7565 = vld [vmem:[%s7452 + $0x1c0] sm:$0xf]
  %v7566 = vld [vmem:[%s7452 + $0x1c4] sm:$0xf]
  %v7567 = vld [vmem:[%s7452 + $0x1c8] sm:$0xf]
  %v7568 = vld [vmem:[%s7452 + $0x1cc] sm:$0xf]
  %v7569 = vld [vmem:[%s7452 + $0x1d0] sm:$0xf]
  %v7570 = vld [vmem:[%s7452 + $0x1d4] sm:$0xf]
  %v7571 = vld [vmem:[%s7452 + $0x1d8] sm:$0xf]
  %v7572 = vld [vmem:[%s7452 + $0x1dc] sm:$0xf]
  %v7573 = vld [vmem:[%s7452 + $0x1e0] sm:$0xf]
  %v7574 = vld [vmem:[%s7452 + $0x1e4] sm:$0xf]
  %v7575 = vld [vmem:[%s7452 + $0x1e8] sm:$0xf]
  %v7576 = vld [vmem:[%s7452 + $0x1ec] sm:$0xf]
  %v7577 = vld [vmem:[%s7452 + $0x1f0] sm:$0xf]
  %v7578 = vld [vmem:[%s7452 + $0x1f4] sm:$0xf]
  %v7579 = vld [vmem:[%s7452 + $0x1f8] sm:$0xf]
  %v7580 = vld [vmem:[%s7452 + $0x1fc] sm:$0xf]
  %s7581 = scalar_lea.vmem %s1, 96
  %v7582 = vld [vmem:[%s7581] sm:$0xf]
  %v7583 = vld [vmem:[%s7581 + $0x4] sm:$0xf]
  %v7584 = vld [vmem:[%s7581 + $0x8] sm:$0xf]
  %v7585 = vld [vmem:[%s7581 + $0xc] sm:$0xf]
  %v7714 = vunpack.c.l.b16 %v7453
  %v7715 = vunpack.c.l.b16 %v7454
  %v7716 = vunpack.c.l.b16 %v7455
  %v7717 = vunpack.c.l.b16 %v7456
  %v7718 = vunpack.c.l.b16 %v7457
  %v7719 = vunpack.c.l.b16 %v7458
  %v7720 = vunpack.c.l.b16 %v7459
  %v7721 = vunpack.c.l.b16 %v7460
  %v7722 = vunpack.c.l.b16 %v7461
  %v7723 = vunpack.c.l.b16 %v7462
  %v7724 = vunpack.c.l.b16 %v7463
  %v7725 = vunpack.c.l.b16 %v7464
  %v7726 = vunpack.c.l.b16 %v7465
  %v7727 = vunpack.c.l.b16 %v7466
  %v7728 = vunpack.c.l.b16 %v7467
  %v7729 = vunpack.c.l.b16 %v7468
  %v7730 = vunpack.c.l.b16 %v7469
  %v7731 = vunpack.c.l.b16 %v7470
  %v7732 = vunpack.c.l.b16 %v7471
  %v7733 = vunpack.c.l.b16 %v7472
  %v7734 = vunpack.c.l.b16 %v7473
  %v7735 = vunpack.c.l.b16 %v7474
  %v7736 = vunpack.c.l.b16 %v7475
  %v7737 = vunpack.c.l.b16 %v7476
  %v7738 = vunpack.c.l.b16 %v7477
  %v7739 = vunpack.c.l.b16 %v7478
  %v7740 = vunpack.c.l.b16 %v7479
  %v7741 = vunpack.c.l.b16 %v7480
  %v7742 = vunpack.c.l.b16 %v7481
  %v7743 = vunpack.c.l.b16 %v7482
  %v7744 = vunpack.c.l.b16 %v7483
  %v7745 = vunpack.c.l.b16 %v7484
  %v7746 = vunpack.c.l.b16 %v7485
  %v7747 = vunpack.c.l.b16 %v7486
  %v7748 = vunpack.c.l.b16 %v7487
  %v7749 = vunpack.c.l.b16 %v7488
  %v7750 = vunpack.c.l.b16 %v7489
  %v7751 = vunpack.c.l.b16 %v7490
  %v7752 = vunpack.c.l.b16 %v7491
  %v7753 = vunpack.c.l.b16 %v7492
  %v7754 = vunpack.c.l.b16 %v7493
  %v7755 = vunpack.c.l.b16 %v7494
  %v7756 = vunpack.c.l.b16 %v7495
  %v7757 = vunpack.c.l.b16 %v7496
  %v7758 = vunpack.c.l.b16 %v7497
  %v7759 = vunpack.c.l.b16 %v7498
  %v7760 = vunpack.c.l.b16 %v7499
  %v7761 = vunpack.c.l.b16 %v7500
  %v7762 = vunpack.c.l.b16 %v7501
  %v7763 = vunpack.c.l.b16 %v7502
  %v7764 = vunpack.c.l.b16 %v7503
  %v7765 = vunpack.c.l.b16 %v7504
  %v7766 = vunpack.c.l.b16 %v7505
  %v7767 = vunpack.c.l.b16 %v7506
  %v7768 = vunpack.c.l.b16 %v7507
  %v7769 = vunpack.c.l.b16 %v7508
  %v7770 = vunpack.c.l.b16 %v7509
  %v7771 = vunpack.c.l.b16 %v7510
  %v7772 = vunpack.c.l.b16 %v7511
  %v7773 = vunpack.c.l.b16 %v7512
  %v7774 = vunpack.c.l.b16 %v7513
  %v7775 = vunpack.c.l.b16 %v7514
  %v7776 = vunpack.c.l.b16 %v7515
  %v7777 = vunpack.c.l.b16 %v7516
  %v7778 = vunpack.c.l.b16 %v7517
  %v7779 = vunpack.c.l.b16 %v7518
  %v7780 = vunpack.c.l.b16 %v7519
  %v7781 = vunpack.c.l.b16 %v7520
  %v7782 = vunpack.c.l.b16 %v7521
  %v7783 = vunpack.c.l.b16 %v7522
  %v7784 = vunpack.c.l.b16 %v7523
  %v7785 = vunpack.c.l.b16 %v7524
  %v7786 = vunpack.c.l.b16 %v7525
  %v7787 = vunpack.c.l.b16 %v7526
  %v7788 = vunpack.c.l.b16 %v7527
  %v7789 = vunpack.c.l.b16 %v7528
  %v7790 = vunpack.c.l.b16 %v7529
  %v7791 = vunpack.c.l.b16 %v7530
  %v7792 = vunpack.c.l.b16 %v7531
  %v7793 = vunpack.c.l.b16 %v7532
  %v7794 = vunpack.c.l.b16 %v7533
  %v7795 = vunpack.c.l.b16 %v7534
  %v7796 = vunpack.c.l.b16 %v7535
  %v7797 = vunpack.c.l.b16 %v7536
  %v7798 = vunpack.c.l.b16 %v7537
  %v7799 = vunpack.c.l.b16 %v7538
  %v7800 = vunpack.c.l.b16 %v7539
  %v7801 = vunpack.c.l.b16 %v7540
  %v7802 = vunpack.c.l.b16 %v7541
  %v7803 = vunpack.c.l.b16 %v7542
  %v7804 = vunpack.c.l.b16 %v7543
  %v7805 = vunpack.c.l.b16 %v7544
  %v7806 = vunpack.c.l.b16 %v7545
  %v7807 = vunpack.c.l.b16 %v7546
  %v7808 = vunpack.c.l.b16 %v7547
  %v7809 = vunpack.c.l.b16 %v7548
  %v7810 = vunpack.c.l.b16 %v7549
  %v7811 = vunpack.c.l.b16 %v7550
  %v7812 = vunpack.c.l.b16 %v7551
  %v7813 = vunpack.c.l.b16 %v7552
  %v7814 = vunpack.c.l.b16 %v7553
  %v7815 = vunpack.c.l.b16 %v7554
  %v7816 = vunpack.c.l.b16 %v7555
  %v7817 = vunpack.c.l.b16 %v7556
  %v7818 = vunpack.c.l.b16 %v7557
  %v7819 = vunpack.c.l.b16 %v7558
  %v7820 = vunpack.c.l.b16 %v7559
  %v7821 = vunpack.c.l.b16 %v7560
  %v7822 = vunpack.c.l.b16 %v7561
  %v7823 = vunpack.c.l.b16 %v7562
  %v7824 = vunpack.c.l.b16 %v7563
  %v7825 = vunpack.c.l.b16 %v7564
  %v7826 = vunpack.c.l.b16 %v7565
  %v7827 = vunpack.c.l.b16 %v7566
  %v7828 = vunpack.c.l.b16 %v7567
  %v7829 = vunpack.c.l.b16 %v7568
  %v7830 = vunpack.c.l.b16 %v7569
  %v7831 = vunpack.c.l.b16 %v7570
  %v7832 = vunpack.c.l.b16 %v7571
  %v7833 = vunpack.c.l.b16 %v7572
  %v7834 = vunpack.c.l.b16 %v7573
  %v7835 = vunpack.c.l.b16 %v7574
  %v7836 = vunpack.c.l.b16 %v7575
  %v7837 = vunpack.c.l.b16 %v7576
  %v7838 = vunpack.c.l.b16 %v7577
  %v7839 = vunpack.c.l.b16 %v7578
  %v7840 = vunpack.c.l.b16 %v7579
  %v7841 = vunpack.c.l.b16 %v7580
  %v7842 = vpack.c.b16 %v7715, %v7714
  %v7843 = vpack.c.b16 %v7717, %v7716
  %v7844 = vpack.c.b16 %v7719, %v7718
  %v7845 = vpack.c.b16 %v7721, %v7720
  %v7846 = vpack.c.b16 %v7723, %v7722
  %v7847 = vpack.c.b16 %v7725, %v7724
  %v7848 = vpack.c.b16 %v7727, %v7726
  %v7849 = vpack.c.b16 %v7729, %v7728
  %v7850 = vpack.c.b16 %v7731, %v7730
  %v7851 = vpack.c.b16 %v7733, %v7732
  %v7852 = vpack.c.b16 %v7735, %v7734
  %v7853 = vpack.c.b16 %v7737, %v7736
  %v7854 = vpack.c.b16 %v7739, %v7738
  %v7855 = vpack.c.b16 %v7741, %v7740
  %v7856 = vpack.c.b16 %v7743, %v7742
  %v7857 = vpack.c.b16 %v7745, %v7744
  %v7858 = vpack.c.b16 %v7747, %v7746
  %v7859 = vpack.c.b16 %v7749, %v7748
  %v7860 = vpack.c.b16 %v7751, %v7750
  %v7861 = vpack.c.b16 %v7753, %v7752
  %v7862 = vpack.c.b16 %v7755, %v7754
  %v7863 = vpack.c.b16 %v7757, %v7756
  %v7864 = vpack.c.b16 %v7759, %v7758
  %v7865 = vpack.c.b16 %v7761, %v7760
  %v7866 = vpack.c.b16 %v7763, %v7762
  %v7867 = vpack.c.b16 %v7765, %v7764
  %v7868 = vpack.c.b16 %v7767, %v7766
  %v7869 = vpack.c.b16 %v7769, %v7768
  %v7870 = vpack.c.b16 %v7771, %v7770
  %v7871 = vpack.c.b16 %v7773, %v7772
  %v7872 = vpack.c.b16 %v7775, %v7774
  %v7873 = vpack.c.b16 %v7777, %v7776
  %v7874 = vpack.c.b16 %v7779, %v7778
  %v7875 = vpack.c.b16 %v7781, %v7780
  %v7876 = vpack.c.b16 %v7783, %v7782
  %v7877 = vpack.c.b16 %v7785, %v7784
  %v7878 = vpack.c.b16 %v7787, %v7786
  %v7879 = vpack.c.b16 %v7789, %v7788
  %v7880 = vpack.c.b16 %v7791, %v7790
  %v7881 = vpack.c.b16 %v7793, %v7792
  %v7882 = vpack.c.b16 %v7795, %v7794
  %v7883 = vpack.c.b16 %v7797, %v7796
  %v7884 = vpack.c.b16 %v7799, %v7798
  %v7885 = vpack.c.b16 %v7801, %v7800
  %v7886 = vpack.c.b16 %v7803, %v7802
  %v7887 = vpack.c.b16 %v7805, %v7804
  %v7888 = vpack.c.b16 %v7807, %v7806
  %v7889 = vpack.c.b16 %v7809, %v7808
  %v7890 = vpack.c.b16 %v7811, %v7810
  %v7891 = vpack.c.b16 %v7813, %v7812
  %v7892 = vpack.c.b16 %v7815, %v7814
  %v7893 = vpack.c.b16 %v7817, %v7816
  %v7894 = vpack.c.b16 %v7819, %v7818
  %v7895 = vpack.c.b16 %v7821, %v7820
  %v7896 = vpack.c.b16 %v7823, %v7822
  %v7897 = vpack.c.b16 %v7825, %v7824
  %v7898 = vpack.c.b16 %v7827, %v7826
  %v7899 = vpack.c.b16 %v7829, %v7828
  %v7900 = vpack.c.b16 %v7831, %v7830
  %v7901 = vpack.c.b16 %v7833, %v7832
  %v7902 = vpack.c.b16 %v7835, %v7834
  %v7903 = vpack.c.b16 %v7837, %v7836
  %v7904 = vpack.c.b16 %v7839, %v7838
  %v7905 = vpack.c.b16 %v7841, %v7840
  %v7910 = vunpack.c.l.b16 %v7582
  %v7911 = vunpack.c.l.b16 %v7583
  %v7912 = vunpack.c.l.b16 %v7584
  %v7913 = vunpack.c.l.b16 %v7585
  %v7914 = vpack.c.b16 %v7911, %v7910
  %v7915 = vpack.c.b16 %v7913, %v7912
  %v7919 = vsel %vm621, %v7842, 0
  %v7922 = vsel %vm621, %v7843, 0
  %v7925 = vsel %vm621, %v7844, 0
  %v7928 = vsel %vm621, %v7845, 0
  %v7931 = vsel %vm621, %v7846, 0
  %v7934 = vsel %vm621, %v7847, 0
  %v7937 = vsel %vm621, %v7848, 0
  %v7940 = vsel %vm621, %v7849, 0
  %v7943 = vsel %vm621, %v7850, 0
  %v7946 = vsel %vm621, %v7851, 0
  %v7949 = vsel %vm621, %v7852, 0
  %v7952 = vsel %vm621, %v7853, 0
  %v7955 = vsel %vm621, %v7854, 0
  %v7958 = vsel %vm621, %v7855, 0
  %v7961 = vsel %vm621, %v7856, 0
  %v7964 = vsel %vm621, %v7857, 0
  %v7967 = vsel %vm621, %v7858, 0
  %v7970 = vsel %vm621, %v7859, 0
  %v7973 = vsel %vm621, %v7860, 0
  %v7976 = vsel %vm621, %v7861, 0
  %v7979 = vsel %vm621, %v7862, 0
  %v7982 = vsel %vm621, %v7863, 0
  %v7985 = vsel %vm621, %v7864, 0
  %v7988 = vsel %vm621, %v7865, 0
  %v7991 = vsel %vm621, %v7866, 0
  %v7994 = vsel %vm621, %v7867, 0
  %v7997 = vsel %vm621, %v7868, 0
  %v8000 = vsel %vm621, %v7869, 0
  %v8003 = vsel %vm621, %v7870, 0
  %v8006 = vsel %vm621, %v7871, 0
  %v8009 = vsel %vm621, %v7872, 0
  %v8012 = vsel %vm621, %v7873, 0
  %v8015 = vsel %vm621, %v7874, 0
  %v8018 = vsel %vm621, %v7875, 0
  %v8021 = vsel %vm621, %v7876, 0
  %v8024 = vsel %vm621, %v7877, 0
  %v8027 = vsel %vm621, %v7878, 0
  %v8030 = vsel %vm621, %v7879, 0
  %v8033 = vsel %vm621, %v7880, 0
  %v8036 = vsel %vm621, %v7881, 0
  %v8039 = vsel %vm621, %v7882, 0
  %v8042 = vsel %vm621, %v7883, 0
  %v8045 = vsel %vm621, %v7884, 0
  %v8048 = vsel %vm621, %v7885, 0
  %v8051 = vsel %vm621, %v7886, 0
  %v8054 = vsel %vm621, %v7887, 0
  %v8057 = vsel %vm621, %v7888, 0
  %v8060 = vsel %vm621, %v7889, 0
  %v8063 = vsel %vm621, %v7890, 0
  %v8066 = vsel %vm621, %v7891, 0
  %v8069 = vsel %vm621, %v7892, 0
  %v8072 = vsel %vm621, %v7893, 0
  %v8075 = vsel %vm621, %v7894, 0
  %v8078 = vsel %vm621, %v7895, 0
  %v8081 = vsel %vm621, %v7896, 0
  %v8084 = vsel %vm621, %v7897, 0
  %v8087 = vsel %vm621, %v7898, 0
  %v8090 = vsel %vm621, %v7899, 0
  %v8093 = vsel %vm621, %v7900, 0
  %v8096 = vsel %vm621, %v7901, 0
  %v8099 = vsel %vm621, %v7902, 0
  %v8102 = vsel %vm621, %v7903, 0
  %v8105 = vsel %vm621, %v7904, 0
  %v8108 = vsel %vm621, %v7905, 0
  %8110 = vmatprep.subr.bf16.mxu0 0
  %8111 = vmatpush1.bf16.msra.mxu0 0
  %8112 = vmatprep.subr.bf16.mxu0 0
  %8113 = vmatpush1.bf16.msra.mxu0 0
  %8114 = vmatprep.subr.bf16.mxu0 0
  %8115 = vmatpush1.bf16.msra.mxu0 0
  %8116 = vmatprep.subr.bf16.mxu0 0
  %8117 = vmatpush1.bf16.msra.mxu0 0
  %8118 = vmatprep.subr.bf16.mxu0 0
  %8119 = vmatpush1.bf16.msra.mxu0 0
  %8120 = vmatprep.subr.bf16.mxu0 0
  %8121 = vmatpush1.bf16.msra.mxu0 0
  %8122 = vmatprep.subr.bf16.mxu0 0
  %8123 = vmatpush1.bf16.msra.mxu0 %v7915
  %8124 = vmatprep.subr.bf16.mxu0 0
  %8125 = vmatpush1.bf16.msra.mxu0 %v7914
  %8126 = vmatprep.subr.bf16.mxu0 0
  %8127 = vmatpush2.bf16.msra.mxu0 0
  %8128 = vmatprep.subr.bf16.mxu0 0
  %8129 = vmatpush2.bf16.msra.mxu0 0
  %8130 = vmatprep.subr.bf16.mxu0 0
  %8131 = vmatpush2.bf16.msra.mxu0 0
  %8132 = vmatprep.subr.bf16.mxu0 0
  %8133 = vmatpush2.bf16.msra.mxu0 0
  %8134 = vmatprep.subr.bf16.mxu0 0
  %8135 = vmatpush2.bf16.msra.mxu0 0
  %8136 = vmatprep.subr.bf16.mxu0 0
  %8137 = vmatpush2.bf16.msra.mxu0 0
  %8138 = vmatprep.subr.bf16.mxu0 0
  %8139 = vmatpush2.bf16.msra.mxu0 0
  %8140 = vmatprep.subr.bf16.mxu0 0
  %8141 = vmatpush2.bf16.msra.mxu0 0
  %8142 = vmatprep.mubr.bf16.mxu0 0
  %8143 = vmatmul.mubr.bf16.gmra.mxu0 %v7919
  %v8144 = vpop.f32.mrf.mxu0
  %v8145 = vadd.f32 0.0, %v8144
  %v8146 = vpop.f32.mrf.mxu0
  %v8147 = vpop.f32.mrf.mxu0
  %v8148 = vadd.f32 0.0, %v8147
  %v8149 = vpop.f32.mrf.mxu0
  %8150 = vmatprep.mubr.bf16.mxu0 0
  %8151 = vmatmul.mubr.bf16.gmra.mxu0 %v7922
  %v8152 = vpop.f32.mrf.mxu0
  %v8153 = vadd.f32 0.0, %v8152
  %v8154 = vpop.f32.mrf.mxu0
  %v8155 = vpop.f32.mrf.mxu0
  %v8156 = vadd.f32 0.0, %v8155
  %v8157 = vpop.f32.mrf.mxu0
  %8158 = vmatprep.mubr.bf16.mxu0 0
  %8159 = vmatmul.mubr.bf16.gmra.mxu0 %v7925
  %v8160 = vpop.f32.mrf.mxu0
  %v8161 = vadd.f32 0.0, %v8160
  %v8162 = vpop.f32.mrf.mxu0
  %v8163 = vpop.f32.mrf.mxu0
  %v8164 = vadd.f32 0.0, %v8163
  %v8165 = vpop.f32.mrf.mxu0
  %8166 = vmatprep.mubr.bf16.mxu0 0
  %8167 = vmatmul.mubr.bf16.gmra.mxu0 %v7928
  %v8168 = vpop.f32.mrf.mxu0
  %v8169 = vadd.f32 0.0, %v8168
  %v8170 = vpop.f32.mrf.mxu0
  %v8171 = vpop.f32.mrf.mxu0
  %v8172 = vadd.f32 0.0, %v8171
  %v8173 = vpop.f32.mrf.mxu0
  %8174 = vmatprep.mubr.bf16.mxu0 0
  %8175 = vmatmul.mubr.bf16.gmra.mxu0 %v7931
  %v8176 = vpop.f32.mrf.mxu0
  %v8177 = vadd.f32 0.0, %v8176
  %v8178 = vpop.f32.mrf.mxu0
  %v8179 = vpop.f32.mrf.mxu0
  %v8180 = vadd.f32 0.0, %v8179
  %v8181 = vpop.f32.mrf.mxu0
  %8182 = vmatprep.mubr.bf16.mxu0 0
  %8183 = vmatmul.mubr.bf16.gmra.mxu0 %v7934
  %v8184 = vpop.f32.mrf.mxu0
  %v8185 = vadd.f32 0.0, %v8184
  %v8186 = vpop.f32.mrf.mxu0
  %v8187 = vpop.f32.mrf.mxu0
  %v8188 = vadd.f32 0.0, %v8187
  %v8189 = vpop.f32.mrf.mxu0
  %8190 = vmatprep.mubr.bf16.mxu0 0
  %8191 = vmatmul.mubr.bf16.gmra.mxu0 %v7937
  %v8192 = vpop.f32.mrf.mxu0
  %v8193 = vadd.f32 0.0, %v8192
  %v8194 = vpop.f32.mrf.mxu0
  %v8195 = vpop.f32.mrf.mxu0
  %v8196 = vadd.f32 0.0, %v8195
  %v8197 = vpop.f32.mrf.mxu0
  %8198 = vmatprep.mubr.bf16.mxu0 0
  %8199 = vmatmul.mubr.bf16.gmra.mxu0 %v7940
  %v8200 = vpop.f32.mrf.mxu0
  %v8201 = vpop.f32.mrf.mxu0
  %v8202 = vpop.f32.mrf.mxu0
  %v8203 = vpop.f32.mrf.mxu0
  %8204 = vmatprep.mubr.bf16.mxu0 0
  %8205 = vmatmul.mubr.bf16.gmra.mxu0 %v7943
  %v8206 = vpop.f32.mrf.mxu0
  %v8207 = vpop.f32.mrf.mxu0
  %v8208 = vpop.f32.mrf.mxu0
  %v8209 = vpop.f32.mrf.mxu0
  %8210 = vmatprep.mubr.bf16.mxu0 0
  %8211 = vmatmul.mubr.bf16.gmra.mxu0 %v7946
  %v8212 = vpop.f32.mrf.mxu0
  %v8213 = vadd.f32 0.0, %v8212
  %v8214 = vpop.f32.mrf.mxu0
  %v8215 = vpop.f32.mrf.mxu0
  %v8216 = vadd.f32 0.0, %v8215
  %v8217 = vpop.f32.mrf.mxu0
  %8218 = vmatprep.mubr.bf16.mxu0 0
  %8219 = vmatmul.mubr.bf16.gmra.mxu0 %v7949
  %v8220 = vpop.f32.mrf.mxu0
  %v8221 = vadd.f32 0.0, %v8220
  %v8222 = vpop.f32.mrf.mxu0
  %v8223 = vpop.f32.mrf.mxu0
  %v8224 = vadd.f32 0.0, %v8223
  %v8225 = vpop.f32.mrf.mxu0
  %8226 = vmatprep.mubr.bf16.mxu0 0
  %8227 = vmatmul.mubr.bf16.gmra.mxu0 %v7952
  %v8228 = vpop.f32.mrf.mxu0
  %v8229 = vadd.f32 0.0, %v8228
  %v8230 = vpop.f32.mrf.mxu0
  %v8231 = vpop.f32.mrf.mxu0
  %v8232 = vadd.f32 0.0, %v8231
  %v8233 = vpop.f32.mrf.mxu0
  %8234 = vmatprep.mubr.bf16.mxu0 0
  %8235 = vmatmul.mubr.bf16.gmra.mxu0 %v7955
  %v8236 = vpop.f32.mrf.mxu0
  %v8237 = vadd.f32 0.0, %v8236
  %v8238 = vpop.f32.mrf.mxu0
  %v8239 = vpop.f32.mrf.mxu0
  %v8240 = vadd.f32 0.0, %v8239
  %v8241 = vpop.f32.mrf.mxu0
  %8242 = vmatprep.mubr.bf16.mxu0 0
  %8243 = vmatmul.mubr.bf16.gmra.mxu0 %v7958
  %v8244 = vpop.f32.mrf.mxu0
  %v8245 = vadd.f32 0.0, %v8244
  %v8246 = vpop.f32.mrf.mxu0
  %v8247 = vpop.f32.mrf.mxu0
  %v8248 = vadd.f32 0.0, %v8247
  %v8249 = vpop.f32.mrf.mxu0
  %8250 = vmatprep.mubr.bf16.mxu0 0
  %8251 = vmatmul.mubr.bf16.gmra.mxu0 %v7961
  %v8252 = vpop.f32.mrf.mxu0
  %v8253 = vadd.f32 0.0, %v8252
  %v8254 = vpop.f32.mrf.mxu0
  %v8255 = vpop.f32.mrf.mxu0
  %v8256 = vadd.f32 0.0, %v8255
  %v8257 = vpop.f32.mrf.mxu0
  %8258 = vmatprep.mubr.bf16.mxu0 0
  %8259 = vmatmul.mubr.bf16.gmra.mxu0 %v7964
  %v8260 = vpop.f32.mrf.mxu0
  %v8261 = vadd.f32 0.0, %v8260
  %v8262 = vpop.f32.mrf.mxu0
  %v8263 = vpop.f32.mrf.mxu0
  %v8264 = vadd.f32 0.0, %v8263
  %v8265 = vpop.f32.mrf.mxu0
  %8266 = vmatprep.mubr.bf16.mxu0 0
  %8267 = vmatmul.mubr.bf16.gmra.mxu0 %v7967
  %v8268 = vpop.f32.mrf.mxu0
  %v8269 = vpop.f32.mrf.mxu0
  %v8270 = vpop.f32.mrf.mxu0
  %v8271 = vpop.f32.mrf.mxu0
  %8272 = vmatprep.mubr.bf16.mxu0 0
  %8273 = vmatmul.mubr.bf16.gmra.mxu0 %v7970
  %v8274 = vpop.f32.mrf.mxu0
  %v8275 = vpop.f32.mrf.mxu0
  %v8276 = vpop.f32.mrf.mxu0
  %v8277 = vpop.f32.mrf.mxu0
  %8278 = vmatprep.mubr.bf16.mxu0 0
  %8279 = vmatmul.mubr.bf16.gmra.mxu0 %v7973
  %v8280 = vpop.f32.mrf.mxu0
  %v8281 = vadd.f32 0.0, %v8280
  %v8282 = vpop.f32.mrf.mxu0
  %v8283 = vpop.f32.mrf.mxu0
  %v8284 = vadd.f32 0.0, %v8283
  %v8285 = vpop.f32.mrf.mxu0
  %8286 = vmatprep.mubr.bf16.mxu0 0
  %8287 = vmatmul.mubr.bf16.gmra.mxu0 %v7976
  %v8288 = vpop.f32.mrf.mxu0
  %v8289 = vadd.f32 0.0, %v8288
  %v8290 = vpop.f32.mrf.mxu0
  %v8291 = vpop.f32.mrf.mxu0
  %v8292 = vadd.f32 0.0, %v8291
  %v8293 = vpop.f32.mrf.mxu0
  %8294 = vmatprep.mubr.bf16.mxu0 0
  %8295 = vmatmul.mubr.bf16.gmra.mxu0 %v7979
  %v8296 = vpop.f32.mrf.mxu0
  %v8297 = vadd.f32 0.0, %v8296
  %v8298 = vpop.f32.mrf.mxu0
  %v8299 = vpop.f32.mrf.mxu0
  %v8300 = vadd.f32 0.0, %v8299
  %v8301 = vpop.f32.mrf.mxu0
  %8302 = vmatprep.mubr.bf16.mxu0 0
  %8303 = vmatmul.mubr.bf16.gmra.mxu0 %v7982
  %v8304 = vpop.f32.mrf.mxu0
  %v8305 = vadd.f32 0.0, %v8304
  %v8306 = vpop.f32.mrf.mxu0
  %v8307 = vpop.f32.mrf.mxu0
  %v8308 = vadd.f32 0.0, %v8307
  %v8309 = vpop.f32.mrf.mxu0
  %8310 = vmatprep.mubr.bf16.mxu0 0
  %8311 = vmatmul.mubr.bf16.gmra.mxu0 %v7985
  %v8312 = vpop.f32.mrf.mxu0
  %v8313 = vadd.f32 0.0, %v8312
  %v8314 = vpop.f32.mrf.mxu0
  %v8315 = vpop.f32.mrf.mxu0
  %v8316 = vadd.f32 0.0, %v8315
  %v8317 = vpop.f32.mrf.mxu0
  %8318 = vmatprep.mubr.bf16.mxu0 0
  %8319 = vmatmul.mubr.bf16.gmra.mxu0 %v7988
  %v8320 = vpop.f32.mrf.mxu0
  %v8321 = vadd.f32 0.0, %v8320
  %v8322 = vpop.f32.mrf.mxu0
  %v8323 = vpop.f32.mrf.mxu0
  %v8324 = vadd.f32 0.0, %v8323
  %v8325 = vpop.f32.mrf.mxu0
  %8326 = vmatprep.mubr.bf16.mxu0 0
  %8327 = vmatmul.mubr.bf16.gmra.mxu0 %v7991
  %v8328 = vpop.f32.mrf.mxu0
  %v8329 = vadd.f32 0.0, %v8328
  %v8330 = vpop.f32.mrf.mxu0
  %v8331 = vpop.f32.mrf.mxu0
  %v8332 = vadd.f32 0.0, %v8331
  %v8333 = vpop.f32.mrf.mxu0
  %8334 = vmatprep.mubr.bf16.mxu0 0
  %8335 = vmatmul.mubr.bf16.gmra.mxu0 %v7994
  %v8336 = vpop.f32.mrf.mxu0
  %v8337 = vpop.f32.mrf.mxu0
  %v8338 = vpop.f32.mrf.mxu0
  %v8339 = vpop.f32.mrf.mxu0
  %8340 = vmatprep.mubr.bf16.mxu0 0
  %8341 = vmatmul.mubr.bf16.gmra.mxu0 %v7997
  %v8342 = vpop.f32.mrf.mxu0
  %v8343 = vpop.f32.mrf.mxu0
  %v8344 = vpop.f32.mrf.mxu0
  %v8345 = vpop.f32.mrf.mxu0
  %8346 = vmatprep.mubr.bf16.mxu0 0
  %8347 = vmatmul.mubr.bf16.gmra.mxu0 %v8000
  %v8348 = vpop.f32.mrf.mxu0
  %v8349 = vadd.f32 0.0, %v8348
  %v8350 = vpop.f32.mrf.mxu0
  %v8351 = vpop.f32.mrf.mxu0
  %v8352 = vadd.f32 0.0, %v8351
  %v8353 = vpop.f32.mrf.mxu0
  %8354 = vmatprep.mubr.bf16.mxu0 0
  %8355 = vmatmul.mubr.bf16.gmra.mxu0 %v8003
  %v8356 = vpop.f32.mrf.mxu0
  %v8357 = vadd.f32 0.0, %v8356
  %v8358 = vpop.f32.mrf.mxu0
  %v8359 = vpop.f32.mrf.mxu0
  %v8360 = vadd.f32 0.0, %v8359
  %v8361 = vpop.f32.mrf.mxu0
  %8362 = vmatprep.mubr.bf16.mxu0 0
  %8363 = vmatmul.mubr.bf16.gmra.mxu0 %v8006
  %v8364 = vpop.f32.mrf.mxu0
  %v8365 = vadd.f32 0.0, %v8364
  %v8366 = vpop.f32.mrf.mxu0
  %v8367 = vpop.f32.mrf.mxu0
  %v8368 = vadd.f32 0.0, %v8367
  %v8369 = vpop.f32.mrf.mxu0
  %8370 = vmatprep.mubr.bf16.mxu0 0
  %8371 = vmatmul.mubr.bf16.gmra.mxu0 %v8009
  %v8372 = vpop.f32.mrf.mxu0
  %v8373 = vadd.f32 0.0, %v8372
  %v8374 = vpop.f32.mrf.mxu0
  %v8375 = vpop.f32.mrf.mxu0
  %v8376 = vadd.f32 0.0, %v8375
  %v8377 = vpop.f32.mrf.mxu0
  %8378 = vmatprep.mubr.bf16.mxu0 0
  %8379 = vmatmul.mubr.bf16.gmra.mxu0 %v8012
  %v8380 = vpop.f32.mrf.mxu0
  %v8381 = vadd.f32 0.0, %v8380
  %v8382 = vpop.f32.mrf.mxu0
  %v8383 = vpop.f32.mrf.mxu0
  %v8384 = vadd.f32 0.0, %v8383
  %v8385 = vpop.f32.mrf.mxu0
  %8386 = vmatprep.mubr.bf16.mxu0 0
  %8387 = vmatmul.mubr.bf16.gmra.mxu0 %v8015
  %v8388 = vpop.f32.mrf.mxu0
  %v8389 = vadd.f32 0.0, %v8388
  %v8390 = vpop.f32.mrf.mxu0
  %v8391 = vpop.f32.mrf.mxu0
  %v8392 = vadd.f32 0.0, %v8391
  %v8393 = vpop.f32.mrf.mxu0
  %8394 = vmatprep.mubr.bf16.mxu0 0
  %8395 = vmatmul.mubr.bf16.gmra.mxu0 %v8018
  %v8396 = vpop.f32.mrf.mxu0
  %v8397 = vadd.f32 0.0, %v8396
  %v8398 = vpop.f32.mrf.mxu0
  %v8399 = vpop.f32.mrf.mxu0
  %v8400 = vadd.f32 0.0, %v8399
  %v8401 = vpop.f32.mrf.mxu0
  %8402 = vmatprep.mubr.bf16.mxu0 0
  %8403 = vmatmul.mubr.bf16.gmra.mxu0 %v8021
  %v8404 = vpop.f32.mrf.mxu0
  %v8405 = vpop.f32.mrf.mxu0
  %v8406 = vpop.f32.mrf.mxu0
  %v8407 = vpop.f32.mrf.mxu0
  %8408 = vmatprep.mubr.bf16.mxu0 0
  %8409 = vmatmul.mubr.bf16.gmra.mxu0 %v8024
  %v8410 = vpop.f32.mrf.mxu0
  %v8411 = vpop.f32.mrf.mxu0
  %v8412 = vpop.f32.mrf.mxu0
  %v8413 = vpop.f32.mrf.mxu0
  %8414 = vmatprep.mubr.bf16.mxu0 0
  %8415 = vmatmul.mubr.bf16.gmra.mxu0 %v8027
  %v8416 = vpop.f32.mrf.mxu0
  %v8417 = vadd.f32 0.0, %v8416
  %v8418 = vpop.f32.mrf.mxu0
  %v8419 = vpop.f32.mrf.mxu0
  %v8420 = vadd.f32 0.0, %v8419
  %v8421 = vpop.f32.mrf.mxu0
  %8422 = vmatprep.mubr.bf16.mxu0 0
  %8423 = vmatmul.mubr.bf16.gmra.mxu0 %v8030
  %v8424 = vpop.f32.mrf.mxu0
  %v8425 = vadd.f32 0.0, %v8424
  %v8426 = vpop.f32.mrf.mxu0
  %v8427 = vpop.f32.mrf.mxu0
  %v8428 = vadd.f32 0.0, %v8427
  %v8429 = vpop.f32.mrf.mxu0
  %8430 = vmatprep.mubr.bf16.mxu0 0
  %8431 = vmatmul.mubr.bf16.gmra.mxu0 %v8033
  %v8432 = vpop.f32.mrf.mxu0
  %v8433 = vadd.f32 0.0, %v8432
  %v8434 = vpop.f32.mrf.mxu0
  %v8435 = vpop.f32.mrf.mxu0
  %v8436 = vadd.f32 0.0, %v8435
  %v8437 = vpop.f32.mrf.mxu0
  %8438 = vmatprep.mubr.bf16.mxu0 0
  %8439 = vmatmul.mubr.bf16.gmra.mxu0 %v8036
  %v8440 = vpop.f32.mrf.mxu0
  %v8441 = vadd.f32 0.0, %v8440
  %v8442 = vpop.f32.mrf.mxu0
  %v8443 = vpop.f32.mrf.mxu0
  %v8444 = vadd.f32 0.0, %v8443
  %v8445 = vpop.f32.mrf.mxu0
  %8446 = vmatprep.mubr.bf16.mxu0 0
  %8447 = vmatmul.mubr.bf16.gmra.mxu0 %v8039
  %v8448 = vpop.f32.mrf.mxu0
  %v8449 = vadd.f32 0.0, %v8448
  %v8450 = vpop.f32.mrf.mxu0
  %v8451 = vpop.f32.mrf.mxu0
  %v8452 = vadd.f32 0.0, %v8451
  %v8453 = vpop.f32.mrf.mxu0
  %8454 = vmatprep.mubr.bf16.mxu0 0
  %8455 = vmatmul.mubr.bf16.gmra.mxu0 %v8042
  %v8456 = vpop.f32.mrf.mxu0
  %v8457 = vadd.f32 0.0, %v8456
  %v8458 = vpop.f32.mrf.mxu0
  %v8459 = vpop.f32.mrf.mxu0
  %v8460 = vadd.f32 0.0, %v8459
  %v8461 = vpop.f32.mrf.mxu0
  %8462 = vmatprep.mubr.bf16.mxu0 0
  %8463 = vmatmul.mubr.bf16.gmra.mxu0 %v8045
  %v8464 = vpop.f32.mrf.mxu0
  %v8465 = vadd.f32 0.0, %v8464
  %v8466 = vpop.f32.mrf.mxu0
  %v8467 = vpop.f32.mrf.mxu0
  %v8468 = vadd.f32 0.0, %v8467
  %v8469 = vpop.f32.mrf.mxu0
  %8470 = vmatprep.mubr.bf16.mxu0 0
  %8471 = vmatmul.mubr.bf16.gmra.mxu0 %v8048
  %v8472 = vpop.f32.mrf.mxu0
  %v8473 = vpop.f32.mrf.mxu0
  %v8474 = vpop.f32.mrf.mxu0
  %v8475 = vpop.f32.mrf.mxu0
  %8476 = vmatprep.mubr.bf16.mxu0 0
  %8477 = vmatmul.mubr.bf16.gmra.mxu0 %v8051
  %v8478 = vpop.f32.mrf.mxu0
  %v8479 = vpop.f32.mrf.mxu0
  %v8480 = vpop.f32.mrf.mxu0
  %v8481 = vpop.f32.mrf.mxu0
  %8482 = vmatprep.mubr.bf16.mxu0 0
  %8483 = vmatmul.mubr.bf16.gmra.mxu0 %v8054
  %v8484 = vpop.f32.mrf.mxu0
  %v8485 = vadd.f32 0.0, %v8484
  %v8486 = vpop.f32.mrf.mxu0
  %v8487 = vpop.f32.mrf.mxu0
  %v8488 = vadd.f32 0.0, %v8487
  %v8489 = vpop.f32.mrf.mxu0
  %8490 = vmatprep.mubr.bf16.mxu0 0
  %8491 = vmatmul.mubr.bf16.gmra.mxu0 %v8057
  %v8492 = vpop.f32.mrf.mxu0
  %v8493 = vadd.f32 0.0, %v8492
  %v8494 = vpop.f32.mrf.mxu0
  %v8495 = vpop.f32.mrf.mxu0
  %v8496 = vadd.f32 0.0, %v8495
  %v8497 = vpop.f32.mrf.mxu0
  %8498 = vmatprep.mubr.bf16.mxu0 0
  %8499 = vmatmul.mubr.bf16.gmra.mxu0 %v8060
  %v8500 = vpop.f32.mrf.mxu0
  %v8501 = vadd.f32 0.0, %v8500
  %v8502 = vpop.f32.mrf.mxu0
  %v8503 = vpop.f32.mrf.mxu0
  %v8504 = vadd.f32 0.0, %v8503
  %v8505 = vpop.f32.mrf.mxu0
  %8506 = vmatprep.mubr.bf16.mxu0 0
  %8507 = vmatmul.mubr.bf16.gmra.mxu0 %v8063
  %v8508 = vpop.f32.mrf.mxu0
  %v8509 = vadd.f32 0.0, %v8508
  %v8510 = vpop.f32.mrf.mxu0
  %v8511 = vpop.f32.mrf.mxu0
  %v8512 = vadd.f32 0.0, %v8511
  %v8513 = vpop.f32.mrf.mxu0
  %8514 = vmatprep.mubr.bf16.mxu0 0
  %8515 = vmatmul.mubr.bf16.gmra.mxu0 %v8066
  %v8516 = vpop.f32.mrf.mxu0
  %v8517 = vadd.f32 0.0, %v8516
  %v8518 = vpop.f32.mrf.mxu0
  %v8519 = vpop.f32.mrf.mxu0
  %v8520 = vadd.f32 0.0, %v8519
  %v8521 = vpop.f32.mrf.mxu0
  %8522 = vmatprep.mubr.bf16.mxu0 0
  %8523 = vmatmul.mubr.bf16.gmra.mxu0 %v8069
  %v8524 = vpop.f32.mrf.mxu0
  %v8525 = vadd.f32 0.0, %v8524
  %v8526 = vpop.f32.mrf.mxu0
  %v8527 = vpop.f32.mrf.mxu0
  %v8528 = vadd.f32 0.0, %v8527
  %v8529 = vpop.f32.mrf.mxu0
  %8530 = vmatprep.mubr.bf16.mxu0 0
  %8531 = vmatmul.mubr.bf16.gmra.mxu0 %v8072
  %v8532 = vpop.f32.mrf.mxu0
  %v8533 = vadd.f32 0.0, %v8532
  %v8534 = vpop.f32.mrf.mxu0
  %v8535 = vpop.f32.mrf.mxu0
  %v8536 = vadd.f32 0.0, %v8535
  %v8537 = vpop.f32.mrf.mxu0
  %8538 = vmatprep.mubr.bf16.mxu0 0
  %8539 = vmatmul.mubr.bf16.gmra.mxu0 %v8075
  %v8540 = vpop.f32.mrf.mxu0
  %v8541 = vpop.f32.mrf.mxu0
  %v8542 = vpop.f32.mrf.mxu0
  %v8543 = vpop.f32.mrf.mxu0
  %8544 = vmatprep.mubr.bf16.mxu0 0
  %8545 = vmatmul.mubr.bf16.gmra.mxu0 %v8078
  %v8546 = vpop.f32.mrf.mxu0
  %v8547 = vpop.f32.mrf.mxu0
  %v8548 = vpop.f32.mrf.mxu0
  %v8549 = vpop.f32.mrf.mxu0
  %8550 = vmatprep.mubr.bf16.mxu0 0
  %8551 = vmatmul.mubr.bf16.gmra.mxu0 %v8081
  %v8552 = vpop.f32.mrf.mxu0
  %v8553 = vadd.f32 0.0, %v8552
  %v8554 = vpop.f32.mrf.mxu0
  %v8555 = vpop.f32.mrf.mxu0
  %v8556 = vadd.f32 0.0, %v8555
  %v8557 = vpop.f32.mrf.mxu0
  %8558 = vmatprep.mubr.bf16.mxu0 0
  %8559 = vmatmul.mubr.bf16.gmra.mxu0 %v8084
  %v8560 = vpop.f32.mrf.mxu0
  %v8561 = vadd.f32 0.0, %v8560
  %v8562 = vpop.f32.mrf.mxu0
  %v8563 = vpop.f32.mrf.mxu0
  %v8564 = vadd.f32 0.0, %v8563
  %v8565 = vpop.f32.mrf.mxu0
  %8566 = vmatprep.mubr.bf16.mxu0 0
  %8567 = vmatmul.mubr.bf16.gmra.mxu0 %v8087
  %v8568 = vpop.f32.mrf.mxu0
  %v8569 = vadd.f32 0.0, %v8568
  %v8570 = vpop.f32.mrf.mxu0
  %v8571 = vpop.f32.mrf.mxu0
  %v8572 = vadd.f32 0.0, %v8571
  %v8573 = vpop.f32.mrf.mxu0
  %8574 = vmatprep.mubr.bf16.mxu0 0
  %8575 = vmatmul.mubr.bf16.gmra.mxu0 %v8090
  %v8576 = vpop.f32.mrf.mxu0
  %v8577 = vadd.f32 0.0, %v8576
  %v8578 = vpop.f32.mrf.mxu0
  %v8579 = vpop.f32.mrf.mxu0
  %v8580 = vadd.f32 0.0, %v8579
  %v8581 = vpop.f32.mrf.mxu0
  %8582 = vmatprep.mubr.bf16.mxu0 0
  %8583 = vmatmul.mubr.bf16.gmra.mxu0 %v8093
  %v8584 = vpop.f32.mrf.mxu0
  %v8585 = vadd.f32 0.0, %v8584
  %v8586 = vpop.f32.mrf.mxu0
  %v8587 = vpop.f32.mrf.mxu0
  %v8588 = vadd.f32 0.0, %v8587
  %v8589 = vpop.f32.mrf.mxu0
  %8590 = vmatprep.mubr.bf16.mxu0 0
  %8591 = vmatmul.mubr.bf16.gmra.mxu0 %v8096
  %v8592 = vpop.f32.mrf.mxu0
  %v8593 = vadd.f32 0.0, %v8592
  %v8594 = vpop.f32.mrf.mxu0
  %v8595 = vpop.f32.mrf.mxu0
  %v8596 = vadd.f32 0.0, %v8595
  %v8597 = vpop.f32.mrf.mxu0
  %8598 = vmatprep.mubr.bf16.mxu0 0
  %8599 = vmatmul.mubr.bf16.gmra.mxu0 %v8099
  %v8600 = vpop.f32.mrf.mxu0
  %v8601 = vadd.f32 0.0, %v8600
  %v8602 = vpop.f32.mrf.mxu0
  %v8603 = vpop.f32.mrf.mxu0
  %v8604 = vadd.f32 0.0, %v8603
  %v8605 = vpop.f32.mrf.mxu0
  %8606 = vmatprep.mubr.bf16.mxu0 0
  %8607 = vmatmul.mubr.bf16.gmra.mxu0 %v8102
  %v8608 = vpop.f32.mrf.mxu0
  %v8609 = vpop.f32.mrf.mxu0
  %v8610 = vpop.f32.mrf.mxu0
  %v8611 = vpop.f32.mrf.mxu0
  %8612 = vmatprep.mubr.bf16.mxu0 0
  %8613 = vmatmul.mubr.bf16.gmra.mxu0 %v8105
  %v8614 = vpop.f32.mrf.mxu0
  %v8615 = vpop.f32.mrf.mxu0
  %v8616 = vpop.f32.mrf.mxu0
  %v8617 = vpop.f32.mrf.mxu0
  %8618 = vmatprep.mubr.bf16.mxu0 0
  %8619 = vmatmul.mubr.bf16.gmra.mxu0 %v8108
  %v8620 = vpop.f32.mrf.mxu0
  %v8621 = vpop.f32.mrf.mxu0
  %v8622 = vpop.f32.mrf.mxu0
  %v8623 = vpop.f32.mrf.mxu0
  %8624 = vdwg.mxu0
  %v8625 = vadd.f32 %v7354, %v8145
  %v8626 = vadd.f32 %v7355, %v8148
  %v8627 = vadd.f32 %v7356, %v8153
  %v8628 = vadd.f32 %v7357, %v8156
  %v8629 = vadd.f32 %v7358, %v8161
  %v8630 = vadd.f32 %v7359, %v8164
  %v8631 = vadd.f32 %v7360, %v8169
  %v8632 = vadd.f32 %v7361, %v8172
  %v8633 = vadd.f32 %v7362, %v8177
  %v8634 = vadd.f32 %v7363, %v8180
  %v8635 = vadd.f32 %v7364, %v8185
  %v8636 = vadd.f32 %v7365, %v8188
  %v8637 = vadd.f32 %v7366, %v8193
  %v8638 = vadd.f32 %v7367, %v8196
  %v8639 = vadd.f32 %v7368, %v8213
  %v8640 = vadd.f32 %v7369, %v8216
  %v8641 = vadd.f32 %v7370, %v8221
  %v8642 = vadd.f32 %v7371, %v8224
  %v8643 = vadd.f32 %v7372, %v8229
  %v8644 = vadd.f32 %v7373, %v8232
  %v8645 = vadd.f32 %v7374, %v8237
  %v8646 = vadd.f32 %v7375, %v8240
  %v8647 = vadd.f32 %v7376, %v8245
  %v8648 = vadd.f32 %v7377, %v8248
  %v8649 = vadd.f32 %v7378, %v8253
  %v8650 = vadd.f32 %v7379, %v8256
  %v8651 = vadd.f32 %v7380, %v8261
  %v8652 = vadd.f32 %v7381, %v8264
  %v8653 = vadd.f32 %v7382, %v8281
  %v8654 = vadd.f32 %v7383, %v8284
  %v8655 = vadd.f32 %v7384, %v8289
  %v8656 = vadd.f32 %v7385, %v8292
  %v8657 = vadd.f32 %v7386, %v8297
  %v8658 = vadd.f32 %v7387, %v8300
  %v8659 = vadd.f32 %v7388, %v8305
  %v8660 = vadd.f32 %v7389, %v8308
  %v8661 = vadd.f32 %v7390, %v8313
  %v8662 = vadd.f32 %v7391, %v8316
  %v8663 = vadd.f32 %v7392, %v8321
  %v8664 = vadd.f32 %v7393, %v8324
  %v8665 = vadd.f32 %v7394, %v8329
  %v8666 = vadd.f32 %v7395, %v8332
  %v8667 = vadd.f32 %v7396, %v8349
  %v8668 = vadd.f32 %v7397, %v8352
  %v8669 = vadd.f32 %v7398, %v8357
  %v8670 = vadd.f32 %v7399, %v8360
  %v8671 = vadd.f32 %v7400, %v8365
  %v8672 = vadd.f32 %v7401, %v8368
  %v8673 = vadd.f32 %v7402, %v8373
  %v8674 = vadd.f32 %v7403, %v8376
  %v8675 = vadd.f32 %v7404, %v8381
  %v8676 = vadd.f32 %v7405, %v8384
  %v8677 = vadd.f32 %v7406, %v8389
  %v8678 = vadd.f32 %v7407, %v8392
  %v8679 = vadd.f32 %v7408, %v8397
  %v8680 = vadd.f32 %v7409, %v8400
  %v8681 = vadd.f32 %v7410, %v8417
  %v8682 = vadd.f32 %v7411, %v8420
  %v8683 = vadd.f32 %v7412, %v8425
  %v8684 = vadd.f32 %v7413, %v8428
  %v8685 = vadd.f32 %v7414, %v8433
  %v8686 = vadd.f32 %v7415, %v8436
  %v8687 = vadd.f32 %v7416, %v8441
  %v8688 = vadd.f32 %v7417, %v8444
  %v8689 = vadd.f32 %v7418, %v8449
  %v8690 = vadd.f32 %v7419, %v8452
  %v8691 = vadd.f32 %v7420, %v8457
  %v8692 = vadd.f32 %v7421, %v8460
  %v8693 = vadd.f32 %v7422, %v8465
  %v8694 = vadd.f32 %v7423, %v8468
  %v8695 = vadd.f32 %v7424, %v8485
  %v8696 = vadd.f32 %v7425, %v8488
  %v8697 = vadd.f32 %v7426, %v8493
  %v8698 = vadd.f32 %v7427, %v8496
  %v8699 = vadd.f32 %v7428, %v8501
  %v8700 = vadd.f32 %v7429, %v8504
  %v8701 = vadd.f32 %v7430, %v8509
  %v8702 = vadd.f32 %v7431, %v8512
  %v8703 = vadd.f32 %v7432, %v8517
  %v8704 = vadd.f32 %v7433, %v8520
  %v8705 = vadd.f32 %v7434, %v8525
  %v8706 = vadd.f32 %v7435, %v8528
  %v8707 = vadd.f32 %v7436, %v8533
  %v8708 = vadd.f32 %v7437, %v8536
  %v8709 = vadd.f32 %v7438, %v8553
  %v8710 = vadd.f32 %v7439, %v8556
  %v8711 = vadd.f32 %v7440, %v8561
  %v8712 = vadd.f32 %v7441, %v8564
  %v8713 = vadd.f32 %v7442, %v8569
  %v8714 = vadd.f32 %v7443, %v8572
  %v8715 = vadd.f32 %v7444, %v8577
  %v8716 = vadd.f32 %v7445, %v8580
  %v8717 = vadd.f32 %v7446, %v8585
  %v8718 = vadd.f32 %v7447, %v8588
  %v8719 = vadd.f32 %v7448, %v8593
  %v8720 = vadd.f32 %v7449, %v8596
  %v8721 = vadd.f32 %v7450, %v8601
  %v8722 = vadd.f32 %v7451, %v8604
  %s8723 = scalar_lea.vmem %s0, 152
  %v8724 = vld [vmem:[%s8723] sm:$0xf]
  %v8725 = vld [vmem:[%s8723 + $0x4] sm:$0xf]
  %v8726 = vld [vmem:[%s8723 + $0x8] sm:$0xf]
  %v8727 = vld [vmem:[%s8723 + $0xc] sm:$0xf]
  %v8728 = vld [vmem:[%s8723 + $0x10] sm:$0xf]
  %v8729 = vld [vmem:[%s8723 + $0x14] sm:$0xf]
  %v8730 = vld [vmem:[%s8723 + $0x18] sm:$0xf]
  %v8731 = vld [vmem:[%s8723 + $0x1c] sm:$0xf]
  %v8732 = vld [vmem:[%s8723 + $0x20] sm:$0xf]
  %v8733 = vld [vmem:[%s8723 + $0x24] sm:$0xf]
  %v8734 = vld [vmem:[%s8723 + $0x28] sm:$0xf]
  %v8735 = vld [vmem:[%s8723 + $0x2c] sm:$0xf]
  %v8736 = vld [vmem:[%s8723 + $0x30] sm:$0xf]
  %v8737 = vld [vmem:[%s8723 + $0x34] sm:$0xf]
  %v8738 = vld [vmem:[%s8723 + $0x38] sm:$0xf]
  %v8739 = vld [vmem:[%s8723 + $0x3c] sm:$0xf]
  %v8740 = vld [vmem:[%s8723 + $0x40] sm:$0xf]
  %v8741 = vld [vmem:[%s8723 + $0x44] sm:$0xf]
  %v8742 = vld [vmem:[%s8723 + $0x48] sm:$0xf]
  %v8743 = vld [vmem:[%s8723 + $0x4c] sm:$0xf]
  %v8744 = vld [vmem:[%s8723 + $0x50] sm:$0xf]
  %v8745 = vld [vmem:[%s8723 + $0x54] sm:$0xf]
  %v8746 = vld [vmem:[%s8723 + $0x58] sm:$0xf]
  %v8747 = vld [vmem:[%s8723 + $0x5c] sm:$0xf]
  %v8748 = vld [vmem:[%s8723 + $0x60] sm:$0xf]
  %v8749 = vld [vmem:[%s8723 + $0x64] sm:$0xf]
  %v8750 = vld [vmem:[%s8723 + $0x68] sm:$0xf]
  %v8751 = vld [vmem:[%s8723 + $0x6c] sm:$0xf]
  %v8752 = vld [vmem:[%s8723 + $0x70] sm:$0xf]
  %v8753 = vld [vmem:[%s8723 + $0x74] sm:$0xf]
  %v8754 = vld [vmem:[%s8723 + $0x78] sm:$0xf]
  %v8755 = vld [vmem:[%s8723 + $0x7c] sm:$0xf]
  %v8756 = vld [vmem:[%s8723 + $0x80] sm:$0xf]
  %v8757 = vld [vmem:[%s8723 + $0x84] sm:$0xf]
  %v8758 = vld [vmem:[%s8723 + $0x88] sm:$0xf]
  %v8759 = vld [vmem:[%s8723 + $0x8c] sm:$0xf]
  %v8760 = vld [vmem:[%s8723 + $0x90] sm:$0xf]
  %v8761 = vld [vmem:[%s8723 + $0x94] sm:$0xf]
  %v8762 = vld [vmem:[%s8723 + $0x98] sm:$0xf]
  %v8763 = vld [vmem:[%s8723 + $0x9c] sm:$0xf]
  %v8764 = vld [vmem:[%s8723 + $0xa0] sm:$0xf]
  %v8765 = vld [vmem:[%s8723 + $0xa4] sm:$0xf]
  %v8766 = vld [vmem:[%s8723 + $0xa8] sm:$0xf]
  %v8767 = vld [vmem:[%s8723 + $0xac] sm:$0xf]
  %v8768 = vld [vmem:[%s8723 + $0xb0] sm:$0xf]
  %v8769 = vld [vmem:[%s8723 + $0xb4] sm:$0xf]
  %v8770 = vld [vmem:[%s8723 + $0xb8] sm:$0xf]
  %v8771 = vld [vmem:[%s8723 + $0xbc] sm:$0xf]
  %v8772 = vld [vmem:[%s8723 + $0xc0] sm:$0xf]
  %v8773 = vld [vmem:[%s8723 + $0xc4] sm:$0xf]
  %v8774 = vld [vmem:[%s8723 + $0xc8] sm:$0xf]
  %v8775 = vld [vmem:[%s8723 + $0xcc] sm:$0xf]
  %v8776 = vld [vmem:[%s8723 + $0xd0] sm:$0xf]
  %v8777 = vld [vmem:[%s8723 + $0xd4] sm:$0xf]
  %v8778 = vld [vmem:[%s8723 + $0xd8] sm:$0xf]
  %v8779 = vld [vmem:[%s8723 + $0xdc] sm:$0xf]
  %v8780 = vld [vmem:[%s8723 + $0xe0] sm:$0xf]
  %v8781 = vld [vmem:[%s8723 + $0xe4] sm:$0xf]
  %v8782 = vld [vmem:[%s8723 + $0xe8] sm:$0xf]
  %v8783 = vld [vmem:[%s8723 + $0xec] sm:$0xf]
  %v8784 = vld [vmem:[%s8723 + $0xf0] sm:$0xf]
  %v8785 = vld [vmem:[%s8723 + $0xf4] sm:$0xf]
  %v8786 = vld [vmem:[%s8723 + $0xf8] sm:$0xf]
  %v8787 = vld [vmem:[%s8723 + $0xfc] sm:$0xf]
  %v8788 = vld [vmem:[%s8723 + $0x100] sm:$0xf]
  %v8789 = vld [vmem:[%s8723 + $0x104] sm:$0xf]
  %v8790 = vld [vmem:[%s8723 + $0x108] sm:$0xf]
  %v8791 = vld [vmem:[%s8723 + $0x10c] sm:$0xf]
  %v8792 = vld [vmem:[%s8723 + $0x110] sm:$0xf]
  %v8793 = vld [vmem:[%s8723 + $0x114] sm:$0xf]
  %v8794 = vld [vmem:[%s8723 + $0x118] sm:$0xf]
  %v8795 = vld [vmem:[%s8723 + $0x11c] sm:$0xf]
  %v8796 = vld [vmem:[%s8723 + $0x120] sm:$0xf]
  %v8797 = vld [vmem:[%s8723 + $0x124] sm:$0xf]
  %v8798 = vld [vmem:[%s8723 + $0x128] sm:$0xf]
  %v8799 = vld [vmem:[%s8723 + $0x12c] sm:$0xf]
  %v8800 = vld [vmem:[%s8723 + $0x130] sm:$0xf]
  %v8801 = vld [vmem:[%s8723 + $0x134] sm:$0xf]
  %v8802 = vld [vmem:[%s8723 + $0x138] sm:$0xf]
  %v8803 = vld [vmem:[%s8723 + $0x13c] sm:$0xf]
  %v8804 = vld [vmem:[%s8723 + $0x140] sm:$0xf]
  %v8805 = vld [vmem:[%s8723 + $0x144] sm:$0xf]
  %v8806 = vld [vmem:[%s8723 + $0x148] sm:$0xf]
  %v8807 = vld [vmem:[%s8723 + $0x14c] sm:$0xf]
  %v8808 = vld [vmem:[%s8723 + $0x150] sm:$0xf]
  %v8809 = vld [vmem:[%s8723 + $0x154] sm:$0xf]
  %v8810 = vld [vmem:[%s8723 + $0x158] sm:$0xf]
  %v8811 = vld [vmem:[%s8723 + $0x15c] sm:$0xf]
  %v8812 = vld [vmem:[%s8723 + $0x160] sm:$0xf]
  %v8813 = vld [vmem:[%s8723 + $0x164] sm:$0xf]
  %v8814 = vld [vmem:[%s8723 + $0x168] sm:$0xf]
  %v8815 = vld [vmem:[%s8723 + $0x16c] sm:$0xf]
  %v8816 = vld [vmem:[%s8723 + $0x170] sm:$0xf]
  %v8817 = vld [vmem:[%s8723 + $0x174] sm:$0xf]
  %v8818 = vld [vmem:[%s8723 + $0x178] sm:$0xf]
  %v8819 = vld [vmem:[%s8723 + $0x17c] sm:$0xf]
  %v8820 = vld [vmem:[%s8723 + $0x180] sm:$0xf]
  %v8821 = vld [vmem:[%s8723 + $0x184] sm:$0xf]
  %v8822 = vld [vmem:[%s8723 + $0x188] sm:$0xf]
  %v8823 = vld [vmem:[%s8723 + $0x18c] sm:$0xf]
  %v8824 = vld [vmem:[%s8723 + $0x190] sm:$0xf]
  %v8825 = vld [vmem:[%s8723 + $0x194] sm:$0xf]
  %v8826 = vld [vmem:[%s8723 + $0x198] sm:$0xf]
  %v8827 = vld [vmem:[%s8723 + $0x19c] sm:$0xf]
  %v8828 = vld [vmem:[%s8723 + $0x1a0] sm:$0xf]
  %v8829 = vld [vmem:[%s8723 + $0x1a4] sm:$0xf]
  %v8830 = vld [vmem:[%s8723 + $0x1a8] sm:$0xf]
  %v8831 = vld [vmem:[%s8723 + $0x1ac] sm:$0xf]
  %v8832 = vld [vmem:[%s8723 + $0x1b0] sm:$0xf]
  %v8833 = vld [vmem:[%s8723 + $0x1b4] sm:$0xf]
  %v8834 = vld [vmem:[%s8723 + $0x1b8] sm:$0xf]
  %v8835 = vld [vmem:[%s8723 + $0x1bc] sm:$0xf]
  %v8836 = vld [vmem:[%s8723 + $0x1c0] sm:$0xf]
  %v8837 = vld [vmem:[%s8723 + $0x1c4] sm:$0xf]
  %v8838 = vld [vmem:[%s8723 + $0x1c8] sm:$0xf]
  %v8839 = vld [vmem:[%s8723 + $0x1cc] sm:$0xf]
  %v8840 = vld [vmem:[%s8723 + $0x1d0] sm:$0xf]
  %v8841 = vld [vmem:[%s8723 + $0x1d4] sm:$0xf]
  %v8842 = vld [vmem:[%s8723 + $0x1d8] sm:$0xf]
  %v8843 = vld [vmem:[%s8723 + $0x1dc] sm:$0xf]
  %v8844 = vld [vmem:[%s8723 + $0x1e0] sm:$0xf]
  %v8845 = vld [vmem:[%s8723 + $0x1e4] sm:$0xf]
  %v8846 = vld [vmem:[%s8723 + $0x1e8] sm:$0xf]
  %v8847 = vld [vmem:[%s8723 + $0x1ec] sm:$0xf]
  %v8848 = vld [vmem:[%s8723 + $0x1f0] sm:$0xf]
  %v8849 = vld [vmem:[%s8723 + $0x1f4] sm:$0xf]
  %v8850 = vld [vmem:[%s8723 + $0x1f8] sm:$0xf]
  %v8851 = vld [vmem:[%s8723 + $0x1fc] sm:$0xf]
  %s8852 = scalar_lea.vmem %s1, 112
  %v8853 = vld [vmem:[%s8852] sm:$0xf]
  %v8854 = vld [vmem:[%s8852 + $0x4] sm:$0xf]
  %v8855 = vld [vmem:[%s8852 + $0x8] sm:$0xf]
  %v8856 = vld [vmem:[%s8852 + $0xc] sm:$0xf]
  %v8985 = vunpack.c.l.b16 %v8724
  %v8986 = vunpack.c.l.b16 %v8725
  %v8987 = vunpack.c.l.b16 %v8726
  %v8988 = vunpack.c.l.b16 %v8727
  %v8989 = vunpack.c.l.b16 %v8728
  %v8990 = vunpack.c.l.b16 %v8729
  %v8991 = vunpack.c.l.b16 %v8730
  %v8992 = vunpack.c.l.b16 %v8731
  %v8993 = vunpack.c.l.b16 %v8732
  %v8994 = vunpack.c.l.b16 %v8733
  %v8995 = vunpack.c.l.b16 %v8734
  %v8996 = vunpack.c.l.b16 %v8735
  %v8997 = vunpack.c.l.b16 %v8736
  %v8998 = vunpack.c.l.b16 %v8737
  %v8999 = vunpack.c.l.b16 %v8738
  %v9000 = vunpack.c.l.b16 %v8739
  %v9001 = vunpack.c.l.b16 %v8740
  %v9002 = vunpack.c.l.b16 %v8741
  %v9003 = vunpack.c.l.b16 %v8742
  %v9004 = vunpack.c.l.b16 %v8743
  %v9005 = vunpack.c.l.b16 %v8744
  %v9006 = vunpack.c.l.b16 %v8745
  %v9007 = vunpack.c.l.b16 %v8746
  %v9008 = vunpack.c.l.b16 %v8747
  %v9009 = vunpack.c.l.b16 %v8748
  %v9010 = vunpack.c.l.b16 %v8749
  %v9011 = vunpack.c.l.b16 %v8750
  %v9012 = vunpack.c.l.b16 %v8751
  %v9013 = vunpack.c.l.b16 %v8752
  %v9014 = vunpack.c.l.b16 %v8753
  %v9015 = vunpack.c.l.b16 %v8754
  %v9016 = vunpack.c.l.b16 %v8755
  %v9017 = vunpack.c.l.b16 %v8756
  %v9018 = vunpack.c.l.b16 %v8757
  %v9019 = vunpack.c.l.b16 %v8758
  %v9020 = vunpack.c.l.b16 %v8759
  %v9021 = vunpack.c.l.b16 %v8760
  %v9022 = vunpack.c.l.b16 %v8761
  %v9023 = vunpack.c.l.b16 %v8762
  %v9024 = vunpack.c.l.b16 %v8763
  %v9025 = vunpack.c.l.b16 %v8764
  %v9026 = vunpack.c.l.b16 %v8765
  %v9027 = vunpack.c.l.b16 %v8766
  %v9028 = vunpack.c.l.b16 %v8767
  %v9029 = vunpack.c.l.b16 %v8768
  %v9030 = vunpack.c.l.b16 %v8769
  %v9031 = vunpack.c.l.b16 %v8770
  %v9032 = vunpack.c.l.b16 %v8771
  %v9033 = vunpack.c.l.b16 %v8772
  %v9034 = vunpack.c.l.b16 %v8773
  %v9035 = vunpack.c.l.b16 %v8774
  %v9036 = vunpack.c.l.b16 %v8775
  %v9037 = vunpack.c.l.b16 %v8776
  %v9038 = vunpack.c.l.b16 %v8777
  %v9039 = vunpack.c.l.b16 %v8778
  %v9040 = vunpack.c.l.b16 %v8779
  %v9041 = vunpack.c.l.b16 %v8780
  %v9042 = vunpack.c.l.b16 %v8781
  %v9043 = vunpack.c.l.b16 %v8782
  %v9044 = vunpack.c.l.b16 %v8783
  %v9045 = vunpack.c.l.b16 %v8784
  %v9046 = vunpack.c.l.b16 %v8785
  %v9047 = vunpack.c.l.b16 %v8786
  %v9048 = vunpack.c.l.b16 %v8787
  %v9049 = vunpack.c.l.b16 %v8788
  %v9050 = vunpack.c.l.b16 %v8789
  %v9051 = vunpack.c.l.b16 %v8790
  %v9052 = vunpack.c.l.b16 %v8791
  %v9053 = vunpack.c.l.b16 %v8792
  %v9054 = vunpack.c.l.b16 %v8793
  %v9055 = vunpack.c.l.b16 %v8794
  %v9056 = vunpack.c.l.b16 %v8795
  %v9057 = vunpack.c.l.b16 %v8796
  %v9058 = vunpack.c.l.b16 %v8797
  %v9059 = vunpack.c.l.b16 %v8798
  %v9060 = vunpack.c.l.b16 %v8799
  %v9061 = vunpack.c.l.b16 %v8800
  %v9062 = vunpack.c.l.b16 %v8801
  %v9063 = vunpack.c.l.b16 %v8802
  %v9064 = vunpack.c.l.b16 %v8803
  %v9065 = vunpack.c.l.b16 %v8804
  %v9066 = vunpack.c.l.b16 %v8805
  %v9067 = vunpack.c.l.b16 %v8806
  %v9068 = vunpack.c.l.b16 %v8807
  %v9069 = vunpack.c.l.b16 %v8808
  %v9070 = vunpack.c.l.b16 %v8809
  %v9071 = vunpack.c.l.b16 %v8810
  %v9072 = vunpack.c.l.b16 %v8811
  %v9073 = vunpack.c.l.b16 %v8812
  %v9074 = vunpack.c.l.b16 %v8813
  %v9075 = vunpack.c.l.b16 %v8814
  %v9076 = vunpack.c.l.b16 %v8815
  %v9077 = vunpack.c.l.b16 %v8816
  %v9078 = vunpack.c.l.b16 %v8817
  %v9079 = vunpack.c.l.b16 %v8818
  %v9080 = vunpack.c.l.b16 %v8819
  %v9081 = vunpack.c.l.b16 %v8820
  %v9082 = vunpack.c.l.b16 %v8821
  %v9083 = vunpack.c.l.b16 %v8822
  %v9084 = vunpack.c.l.b16 %v8823
  %v9085 = vunpack.c.l.b16 %v8824
  %v9086 = vunpack.c.l.b16 %v8825
  %v9087 = vunpack.c.l.b16 %v8826
  %v9088 = vunpack.c.l.b16 %v8827
  %v9089 = vunpack.c.l.b16 %v8828
  %v9090 = vunpack.c.l.b16 %v8829
  %v9091 = vunpack.c.l.b16 %v8830
  %v9092 = vunpack.c.l.b16 %v8831
  %v9093 = vunpack.c.l.b16 %v8832
  %v9094 = vunpack.c.l.b16 %v8833
  %v9095 = vunpack.c.l.b16 %v8834
  %v9096 = vunpack.c.l.b16 %v8835
  %v9097 = vunpack.c.l.b16 %v8836
  %v9098 = vunpack.c.l.b16 %v8837
  %v9099 = vunpack.c.l.b16 %v8838
  %v9100 = vunpack.c.l.b16 %v8839
  %v9101 = vunpack.c.l.b16 %v8840
  %v9102 = vunpack.c.l.b16 %v8841
  %v9103 = vunpack.c.l.b16 %v8842
  %v9104 = vunpack.c.l.b16 %v8843
  %v9105 = vunpack.c.l.b16 %v8844
  %v9106 = vunpack.c.l.b16 %v8845
  %v9107 = vunpack.c.l.b16 %v8846
  %v9108 = vunpack.c.l.b16 %v8847
  %v9109 = vunpack.c.l.b16 %v8848
  %v9110 = vunpack.c.l.b16 %v8849
  %v9111 = vunpack.c.l.b16 %v8850
  %v9112 = vunpack.c.l.b16 %v8851
  %v9113 = vpack.c.b16 %v8986, %v8985
  %v9114 = vpack.c.b16 %v8988, %v8987
  %v9115 = vpack.c.b16 %v8990, %v8989
  %v9116 = vpack.c.b16 %v8992, %v8991
  %v9117 = vpack.c.b16 %v8994, %v8993
  %v9118 = vpack.c.b16 %v8996, %v8995
  %v9119 = vpack.c.b16 %v8998, %v8997
  %v9120 = vpack.c.b16 %v9000, %v8999
  %v9121 = vpack.c.b16 %v9002, %v9001
  %v9122 = vpack.c.b16 %v9004, %v9003
  %v9123 = vpack.c.b16 %v9006, %v9005
  %v9124 = vpack.c.b16 %v9008, %v9007
  %v9125 = vpack.c.b16 %v9010, %v9009
  %v9126 = vpack.c.b16 %v9012, %v9011
  %v9127 = vpack.c.b16 %v9014, %v9013
  %v9128 = vpack.c.b16 %v9016, %v9015
  %v9129 = vpack.c.b16 %v9018, %v9017
  %v9130 = vpack.c.b16 %v9020, %v9019
  %v9131 = vpack.c.b16 %v9022, %v9021
  %v9132 = vpack.c.b16 %v9024, %v9023
  %v9133 = vpack.c.b16 %v9026, %v9025
  %v9134 = vpack.c.b16 %v9028, %v9027
  %v9135 = vpack.c.b16 %v9030, %v9029
  %v9136 = vpack.c.b16 %v9032, %v9031
  %v9137 = vpack.c.b16 %v9034, %v9033
  %v9138 = vpack.c.b16 %v9036, %v9035
  %v9139 = vpack.c.b16 %v9038, %v9037
  %v9140 = vpack.c.b16 %v9040, %v9039
  %v9141 = vpack.c.b16 %v9042, %v9041
  %v9142 = vpack.c.b16 %v9044, %v9043
  %v9143 = vpack.c.b16 %v9046, %v9045
  %v9144 = vpack.c.b16 %v9048, %v9047
  %v9145 = vpack.c.b16 %v9050, %v9049
  %v9146 = vpack.c.b16 %v9052, %v9051
  %v9147 = vpack.c.b16 %v9054, %v9053
  %v9148 = vpack.c.b16 %v9056, %v9055
  %v9149 = vpack.c.b16 %v9058, %v9057
  %v9150 = vpack.c.b16 %v9060, %v9059
  %v9151 = vpack.c.b16 %v9062, %v9061
  %v9152 = vpack.c.b16 %v9064, %v9063
  %v9153 = vpack.c.b16 %v9066, %v9065
  %v9154 = vpack.c.b16 %v9068, %v9067
  %v9155 = vpack.c.b16 %v9070, %v9069
  %v9156 = vpack.c.b16 %v9072, %v9071
  %v9157 = vpack.c.b16 %v9074, %v9073
  %v9158 = vpack.c.b16 %v9076, %v9075
  %v9159 = vpack.c.b16 %v9078, %v9077
  %v9160 = vpack.c.b16 %v9080, %v9079
  %v9161 = vpack.c.b16 %v9082, %v9081
  %v9162 = vpack.c.b16 %v9084, %v9083
  %v9163 = vpack.c.b16 %v9086, %v9085
  %v9164 = vpack.c.b16 %v9088, %v9087
  %v9165 = vpack.c.b16 %v9090, %v9089
  %v9166 = vpack.c.b16 %v9092, %v9091
  %v9167 = vpack.c.b16 %v9094, %v9093
  %v9168 = vpack.c.b16 %v9096, %v9095
  %v9169 = vpack.c.b16 %v9098, %v9097
  %v9170 = vpack.c.b16 %v9100, %v9099
  %v9171 = vpack.c.b16 %v9102, %v9101
  %v9172 = vpack.c.b16 %v9104, %v9103
  %v9173 = vpack.c.b16 %v9106, %v9105
  %v9174 = vpack.c.b16 %v9108, %v9107
  %v9175 = vpack.c.b16 %v9110, %v9109
  %v9176 = vpack.c.b16 %v9112, %v9111
  %v9181 = vunpack.c.l.b16 %v8853
  %v9182 = vunpack.c.l.b16 %v8854
  %v9183 = vunpack.c.l.b16 %v8855
  %v9184 = vunpack.c.l.b16 %v8856
  %v9185 = vpack.c.b16 %v9182, %v9181
  %v9186 = vpack.c.b16 %v9184, %v9183
  %v9190 = vsel %vm621, %v9113, 0
  %v9193 = vsel %vm621, %v9114, 0
  %v9196 = vsel %vm621, %v9115, 0
  %v9199 = vsel %vm621, %v9116, 0
  %v9202 = vsel %vm621, %v9117, 0
  %v9205 = vsel %vm621, %v9118, 0
  %v9208 = vsel %vm621, %v9119, 0
  %v9211 = vsel %vm621, %v9120, 0
  %v9214 = vsel %vm621, %v9121, 0
  %v9217 = vsel %vm621, %v9122, 0
  %v9220 = vsel %vm621, %v9123, 0
  %v9223 = vsel %vm621, %v9124, 0
  %v9226 = vsel %vm621, %v9125, 0
  %v9229 = vsel %vm621, %v9126, 0
  %v9232 = vsel %vm621, %v9127, 0
  %v9235 = vsel %vm621, %v9128, 0
  %v9238 = vsel %vm621, %v9129, 0
  %v9241 = vsel %vm621, %v9130, 0
  %v9244 = vsel %vm621, %v9131, 0
  %v9247 = vsel %vm621, %v9132, 0
  %v9250 = vsel %vm621, %v9133, 0
  %v9253 = vsel %vm621, %v9134, 0
  %v9256 = vsel %vm621, %v9135, 0
  %v9259 = vsel %vm621, %v9136, 0
  %v9262 = vsel %vm621, %v9137, 0
  %v9265 = vsel %vm621, %v9138, 0
  %v9268 = vsel %vm621, %v9139, 0
  %v9271 = vsel %vm621, %v9140, 0
  %v9274 = vsel %vm621, %v9141, 0
  %v9277 = vsel %vm621, %v9142, 0
  %v9280 = vsel %vm621, %v9143, 0
  %v9283 = vsel %vm621, %v9144, 0
  %v9286 = vsel %vm621, %v9145, 0
  %v9289 = vsel %vm621, %v9146, 0
  %v9292 = vsel %vm621, %v9147, 0
  %v9295 = vsel %vm621, %v9148, 0
  %v9298 = vsel %vm621, %v9149, 0
  %v9301 = vsel %vm621, %v9150, 0
  %v9304 = vsel %vm621, %v9151, 0
  %v9307 = vsel %vm621, %v9152, 0
  %v9310 = vsel %vm621, %v9153, 0
  %v9313 = vsel %vm621, %v9154, 0
  %v9316 = vsel %vm621, %v9155, 0
  %v9319 = vsel %vm621, %v9156, 0
  %v9322 = vsel %vm621, %v9157, 0
  %v9325 = vsel %vm621, %v9158, 0
  %v9328 = vsel %vm621, %v9159, 0
  %v9331 = vsel %vm621, %v9160, 0
  %v9334 = vsel %vm621, %v9161, 0
  %v9337 = vsel %vm621, %v9162, 0
  %v9340 = vsel %vm621, %v9163, 0
  %v9343 = vsel %vm621, %v9164, 0
  %v9346 = vsel %vm621, %v9165, 0
  %v9349 = vsel %vm621, %v9166, 0
  %v9352 = vsel %vm621, %v9167, 0
  %v9355 = vsel %vm621, %v9168, 0
  %v9358 = vsel %vm621, %v9169, 0
  %v9361 = vsel %vm621, %v9170, 0
  %v9364 = vsel %vm621, %v9171, 0
  %v9367 = vsel %vm621, %v9172, 0
  %v9370 = vsel %vm621, %v9173, 0
  %v9373 = vsel %vm621, %v9174, 0
  %v9376 = vsel %vm621, %v9175, 0
  %v9379 = vsel %vm621, %v9176, 0
  %9381 = vmatprep.subr.bf16.mxu0 0
  %9382 = vmatpush1.bf16.msra.mxu0 0
  %9383 = vmatprep.subr.bf16.mxu0 0
  %9384 = vmatpush1.bf16.msra.mxu0 0
  %9385 = vmatprep.subr.bf16.mxu0 0
  %9386 = vmatpush1.bf16.msra.mxu0 0
  %9387 = vmatprep.subr.bf16.mxu0 0
  %9388 = vmatpush1.bf16.msra.mxu0 0
  %9389 = vmatprep.subr.bf16.mxu0 0
  %9390 = vmatpush1.bf16.msra.mxu0 0
  %9391 = vmatprep.subr.bf16.mxu0 0
  %9392 = vmatpush1.bf16.msra.mxu0 0
  %9393 = vmatprep.subr.bf16.mxu0 0
  %9394 = vmatpush1.bf16.msra.mxu0 %v9186
  %9395 = vmatprep.subr.bf16.mxu0 0
  %9396 = vmatpush1.bf16.msra.mxu0 %v9185
  %9397 = vmatprep.subr.bf16.mxu0 0
  %9398 = vmatpush2.bf16.msra.mxu0 0
  %9399 = vmatprep.subr.bf16.mxu0 0
  %9400 = vmatpush2.bf16.msra.mxu0 0
  %9401 = vmatprep.subr.bf16.mxu0 0
  %9402 = vmatpush2.bf16.msra.mxu0 0
  %9403 = vmatprep.subr.bf16.mxu0 0
  %9404 = vmatpush2.bf16.msra.mxu0 0
  %9405 = vmatprep.subr.bf16.mxu0 0
  %9406 = vmatpush2.bf16.msra.mxu0 0
  %9407 = vmatprep.subr.bf16.mxu0 0
  %9408 = vmatpush2.bf16.msra.mxu0 0
  %9409 = vmatprep.subr.bf16.mxu0 0
  %9410 = vmatpush2.bf16.msra.mxu0 0
  %9411 = vmatprep.subr.bf16.mxu0 0
  %9412 = vmatpush2.bf16.msra.mxu0 0
  %9413 = vmatprep.mubr.bf16.mxu0 0
  %9414 = vmatmul.mubr.bf16.gmra.mxu0 %v9190
  %v9415 = vpop.f32.mrf.mxu0
  %v9416 = vadd.f32 0.0, %v9415
  %v9417 = vpop.f32.mrf.mxu0
  %v9418 = vpop.f32.mrf.mxu0
  %v9419 = vadd.f32 0.0, %v9418
  %v9420 = vpop.f32.mrf.mxu0
  %9421 = vmatprep.mubr.bf16.mxu0 0
  %9422 = vmatmul.mubr.bf16.gmra.mxu0 %v9193
  %v9423 = vpop.f32.mrf.mxu0
  %v9424 = vadd.f32 0.0, %v9423
  %v9425 = vpop.f32.mrf.mxu0
  %v9426 = vpop.f32.mrf.mxu0
  %v9427 = vadd.f32 0.0, %v9426
  %v9428 = vpop.f32.mrf.mxu0
  %9429 = vmatprep.mubr.bf16.mxu0 0
  %9430 = vmatmul.mubr.bf16.gmra.mxu0 %v9196
  %v9431 = vpop.f32.mrf.mxu0
  %v9432 = vadd.f32 0.0, %v9431
  %v9433 = vpop.f32.mrf.mxu0
  %v9434 = vpop.f32.mrf.mxu0
  %v9435 = vadd.f32 0.0, %v9434
  %v9436 = vpop.f32.mrf.mxu0
  %9437 = vmatprep.mubr.bf16.mxu0 0
  %9438 = vmatmul.mubr.bf16.gmra.mxu0 %v9199
  %v9439 = vpop.f32.mrf.mxu0
  %v9440 = vadd.f32 0.0, %v9439
  %v9441 = vpop.f32.mrf.mxu0
  %v9442 = vpop.f32.mrf.mxu0
  %v9443 = vadd.f32 0.0, %v9442
  %v9444 = vpop.f32.mrf.mxu0
  %9445 = vmatprep.mubr.bf16.mxu0 0
  %9446 = vmatmul.mubr.bf16.gmra.mxu0 %v9202
  %v9447 = vpop.f32.mrf.mxu0
  %v9448 = vadd.f32 0.0, %v9447
  %v9449 = vpop.f32.mrf.mxu0
  %v9450 = vpop.f32.mrf.mxu0
  %v9451 = vadd.f32 0.0, %v9450
  %v9452 = vpop.f32.mrf.mxu0
  %9453 = vmatprep.mubr.bf16.mxu0 0
  %9454 = vmatmul.mubr.bf16.gmra.mxu0 %v9205
  %v9455 = vpop.f32.mrf.mxu0
  %v9456 = vadd.f32 0.0, %v9455
  %v9457 = vpop.f32.mrf.mxu0
  %v9458 = vpop.f32.mrf.mxu0
  %v9459 = vadd.f32 0.0, %v9458
  %v9460 = vpop.f32.mrf.mxu0
  %9461 = vmatprep.mubr.bf16.mxu0 0
  %9462 = vmatmul.mubr.bf16.gmra.mxu0 %v9208
  %v9463 = vpop.f32.mrf.mxu0
  %v9464 = vadd.f32 0.0, %v9463
  %v9465 = vpop.f32.mrf.mxu0
  %v9466 = vpop.f32.mrf.mxu0
  %v9467 = vadd.f32 0.0, %v9466
  %v9468 = vpop.f32.mrf.mxu0
  %9469 = vmatprep.mubr.bf16.mxu0 0
  %9470 = vmatmul.mubr.bf16.gmra.mxu0 %v9211
  %v9471 = vpop.f32.mrf.mxu0
  %v9472 = vpop.f32.mrf.mxu0
  %v9473 = vpop.f32.mrf.mxu0
  %v9474 = vpop.f32.mrf.mxu0
  %9475 = vmatprep.mubr.bf16.mxu0 0
  %9476 = vmatmul.mubr.bf16.gmra.mxu0 %v9214
  %v9477 = vpop.f32.mrf.mxu0
  %v9478 = vpop.f32.mrf.mxu0
  %v9479 = vpop.f32.mrf.mxu0
  %v9480 = vpop.f32.mrf.mxu0
  %9481 = vmatprep.mubr.bf16.mxu0 0
  %9482 = vmatmul.mubr.bf16.gmra.mxu0 %v9217
  %v9483 = vpop.f32.mrf.mxu0
  %v9484 = vadd.f32 0.0, %v9483
  %v9485 = vpop.f32.mrf.mxu0
  %v9486 = vpop.f32.mrf.mxu0
  %v9487 = vadd.f32 0.0, %v9486
  %v9488 = vpop.f32.mrf.mxu0
  %9489 = vmatprep.mubr.bf16.mxu0 0
  %9490 = vmatmul.mubr.bf16.gmra.mxu0 %v9220
  %v9491 = vpop.f32.mrf.mxu0
  %v9492 = vadd.f32 0.0, %v9491
  %v9493 = vpop.f32.mrf.mxu0
  %v9494 = vpop.f32.mrf.mxu0
  %v9495 = vadd.f32 0.0, %v9494
  %v9496 = vpop.f32.mrf.mxu0
  %9497 = vmatprep.mubr.bf16.mxu0 0
  %9498 = vmatmul.mubr.bf16.gmra.mxu0 %v9223
  %v9499 = vpop.f32.mrf.mxu0
  %v9500 = vadd.f32 0.0, %v9499
  %v9501 = vpop.f32.mrf.mxu0
  %v9502 = vpop.f32.mrf.mxu0
  %v9503 = vadd.f32 0.0, %v9502
  %v9504 = vpop.f32.mrf.mxu0
  %9505 = vmatprep.mubr.bf16.mxu0 0
  %9506 = vmatmul.mubr.bf16.gmra.mxu0 %v9226
  %v9507 = vpop.f32.mrf.mxu0
  %v9508 = vadd.f32 0.0, %v9507
  %v9509 = vpop.f32.mrf.mxu0
  %v9510 = vpop.f32.mrf.mxu0
  %v9511 = vadd.f32 0.0, %v9510
  %v9512 = vpop.f32.mrf.mxu0
  %9513 = vmatprep.mubr.bf16.mxu0 0
  %9514 = vmatmul.mubr.bf16.gmra.mxu0 %v9229
  %v9515 = vpop.f32.mrf.mxu0
  %v9516 = vadd.f32 0.0, %v9515
  %v9517 = vpop.f32.mrf.mxu0
  %v9518 = vpop.f32.mrf.mxu0
  %v9519 = vadd.f32 0.0, %v9518
  %v9520 = vpop.f32.mrf.mxu0
  %9521 = vmatprep.mubr.bf16.mxu0 0
  %9522 = vmatmul.mubr.bf16.gmra.mxu0 %v9232
  %v9523 = vpop.f32.mrf.mxu0
  %v9524 = vadd.f32 0.0, %v9523
  %v9525 = vpop.f32.mrf.mxu0
  %v9526 = vpop.f32.mrf.mxu0
  %v9527 = vadd.f32 0.0, %v9526
  %v9528 = vpop.f32.mrf.mxu0
  %9529 = vmatprep.mubr.bf16.mxu0 0
  %9530 = vmatmul.mubr.bf16.gmra.mxu0 %v9235
  %v9531 = vpop.f32.mrf.mxu0
  %v9532 = vadd.f32 0.0, %v9531
  %v9533 = vpop.f32.mrf.mxu0
  %v9534 = vpop.f32.mrf.mxu0
  %v9535 = vadd.f32 0.0, %v9534
  %v9536 = vpop.f32.mrf.mxu0
  %9537 = vmatprep.mubr.bf16.mxu0 0
  %9538 = vmatmul.mubr.bf16.gmra.mxu0 %v9238
  %v9539 = vpop.f32.mrf.mxu0
  %v9540 = vpop.f32.mrf.mxu0
  %v9541 = vpop.f32.mrf.mxu0
  %v9542 = vpop.f32.mrf.mxu0
  %9543 = vmatprep.mubr.bf16.mxu0 0
  %9544 = vmatmul.mubr.bf16.gmra.mxu0 %v9241
  %v9545 = vpop.f32.mrf.mxu0
  %v9546 = vpop.f32.mrf.mxu0
  %v9547 = vpop.f32.mrf.mxu0
  %v9548 = vpop.f32.mrf.mxu0
  %9549 = vmatprep.mubr.bf16.mxu0 0
  %9550 = vmatmul.mubr.bf16.gmra.mxu0 %v9244
  %v9551 = vpop.f32.mrf.mxu0
  %v9552 = vadd.f32 0.0, %v9551
  %v9553 = vpop.f32.mrf.mxu0
  %v9554 = vpop.f32.mrf.mxu0
  %v9555 = vadd.f32 0.0, %v9554
  %v9556 = vpop.f32.mrf.mxu0
  %9557 = vmatprep.mubr.bf16.mxu0 0
  %9558 = vmatmul.mubr.bf16.gmra.mxu0 %v9247
  %v9559 = vpop.f32.mrf.mxu0
  %v9560 = vadd.f32 0.0, %v9559
  %v9561 = vpop.f32.mrf.mxu0
  %v9562 = vpop.f32.mrf.mxu0
  %v9563 = vadd.f32 0.0, %v9562
  %v9564 = vpop.f32.mrf.mxu0
  %9565 = vmatprep.mubr.bf16.mxu0 0
  %9566 = vmatmul.mubr.bf16.gmra.mxu0 %v9250
  %v9567 = vpop.f32.mrf.mxu0
  %v9568 = vadd.f32 0.0, %v9567
  %v9569 = vpop.f32.mrf.mxu0
  %v9570 = vpop.f32.mrf.mxu0
  %v9571 = vadd.f32 0.0, %v9570
  %v9572 = vpop.f32.mrf.mxu0
  %9573 = vmatprep.mubr.bf16.mxu0 0
  %9574 = vmatmul.mubr.bf16.gmra.mxu0 %v9253
  %v9575 = vpop.f32.mrf.mxu0
  %v9576 = vadd.f32 0.0, %v9575
  %v9577 = vpop.f32.mrf.mxu0
  %v9578 = vpop.f32.mrf.mxu0
  %v9579 = vadd.f32 0.0, %v9578
  %v9580 = vpop.f32.mrf.mxu0
  %9581 = vmatprep.mubr.bf16.mxu0 0
  %9582 = vmatmul.mubr.bf16.gmra.mxu0 %v9256
  %v9583 = vpop.f32.mrf.mxu0
  %v9584 = vadd.f32 0.0, %v9583
  %v9585 = vpop.f32.mrf.mxu0
  %v9586 = vpop.f32.mrf.mxu0
  %v9587 = vadd.f32 0.0, %v9586
  %v9588 = vpop.f32.mrf.mxu0
  %9589 = vmatprep.mubr.bf16.mxu0 0
  %9590 = vmatmul.mubr.bf16.gmra.mxu0 %v9259
  %v9591 = vpop.f32.mrf.mxu0
  %v9592 = vadd.f32 0.0, %v9591
  %v9593 = vpop.f32.mrf.mxu0
  %v9594 = vpop.f32.mrf.mxu0
  %v9595 = vadd.f32 0.0, %v9594
  %v9596 = vpop.f32.mrf.mxu0
  %9597 = vmatprep.mubr.bf16.mxu0 0
  %9598 = vmatmul.mubr.bf16.gmra.mxu0 %v9262
  %v9599 = vpop.f32.mrf.mxu0
  %v9600 = vadd.f32 0.0, %v9599
  %v9601 = vpop.f32.mrf.mxu0
  %v9602 = vpop.f32.mrf.mxu0
  %v9603 = vadd.f32 0.0, %v9602
  %v9604 = vpop.f32.mrf.mxu0
  %9605 = vmatprep.mubr.bf16.mxu0 0
  %9606 = vmatmul.mubr.bf16.gmra.mxu0 %v9265
  %v9607 = vpop.f32.mrf.mxu0
  %v9608 = vpop.f32.mrf.mxu0
  %v9609 = vpop.f32.mrf.mxu0
  %v9610 = vpop.f32.mrf.mxu0
  %9611 = vmatprep.mubr.bf16.mxu0 0
  %9612 = vmatmul.mubr.bf16.gmra.mxu0 %v9268
  %v9613 = vpop.f32.mrf.mxu0
  %v9614 = vpop.f32.mrf.mxu0
  %v9615 = vpop.f32.mrf.mxu0
  %v9616 = vpop.f32.mrf.mxu0
  %9617 = vmatprep.mubr.bf16.mxu0 0
  %9618 = vmatmul.mubr.bf16.gmra.mxu0 %v9271
  %v9619 = vpop.f32.mrf.mxu0
  %v9620 = vadd.f32 0.0, %v9619
  %v9621 = vpop.f32.mrf.mxu0
  %v9622 = vpop.f32.mrf.mxu0
  %v9623 = vadd.f32 0.0, %v9622
  %v9624 = vpop.f32.mrf.mxu0
  %9625 = vmatprep.mubr.bf16.mxu0 0
  %9626 = vmatmul.mubr.bf16.gmra.mxu0 %v9274
  %v9627 = vpop.f32.mrf.mxu0
  %v9628 = vadd.f32 0.0, %v9627
  %v9629 = vpop.f32.mrf.mxu0
  %v9630 = vpop.f32.mrf.mxu0
  %v9631 = vadd.f32 0.0, %v9630
  %v9632 = vpop.f32.mrf.mxu0
  %9633 = vmatprep.mubr.bf16.mxu0 0
  %9634 = vmatmul.mubr.bf16.gmra.mxu0 %v9277
  %v9635 = vpop.f32.mrf.mxu0
  %v9636 = vadd.f32 0.0, %v9635
  %v9637 = vpop.f32.mrf.mxu0
  %v9638 = vpop.f32.mrf.mxu0
  %v9639 = vadd.f32 0.0, %v9638
  %v9640 = vpop.f32.mrf.mxu0
  %9641 = vmatprep.mubr.bf16.mxu0 0
  %9642 = vmatmul.mubr.bf16.gmra.mxu0 %v9280
  %v9643 = vpop.f32.mrf.mxu0
  %v9644 = vadd.f32 0.0, %v9643
  %v9645 = vpop.f32.mrf.mxu0
  %v9646 = vpop.f32.mrf.mxu0
  %v9647 = vadd.f32 0.0, %v9646
  %v9648 = vpop.f32.mrf.mxu0
  %9649 = vmatprep.mubr.bf16.mxu0 0
  %9650 = vmatmul.mubr.bf16.gmra.mxu0 %v9283
  %v9651 = vpop.f32.mrf.mxu0
  %v9652 = vadd.f32 0.0, %v9651
  %v9653 = vpop.f32.mrf.mxu0
  %v9654 = vpop.f32.mrf.mxu0
  %v9655 = vadd.f32 0.0, %v9654
  %v9656 = vpop.f32.mrf.mxu0
  %9657 = vmatprep.mubr.bf16.mxu0 0
  %9658 = vmatmul.mubr.bf16.gmra.mxu0 %v9286
  %v9659 = vpop.f32.mrf.mxu0
  %v9660 = vadd.f32 0.0, %v9659
  %v9661 = vpop.f32.mrf.mxu0
  %v9662 = vpop.f32.mrf.mxu0
  %v9663 = vadd.f32 0.0, %v9662
  %v9664 = vpop.f32.mrf.mxu0
  %9665 = vmatprep.mubr.bf16.mxu0 0
  %9666 = vmatmul.mubr.bf16.gmra.mxu0 %v9289
  %v9667 = vpop.f32.mrf.mxu0
  %v9668 = vadd.f32 0.0, %v9667
  %v9669 = vpop.f32.mrf.mxu0
  %v9670 = vpop.f32.mrf.mxu0
  %v9671 = vadd.f32 0.0, %v9670
  %v9672 = vpop.f32.mrf.mxu0
  %9673 = vmatprep.mubr.bf16.mxu0 0
  %9674 = vmatmul.mubr.bf16.gmra.mxu0 %v9292
  %v9675 = vpop.f32.mrf.mxu0
  %v9676 = vpop.f32.mrf.mxu0
  %v9677 = vpop.f32.mrf.mxu0
  %v9678 = vpop.f32.mrf.mxu0
  %9679 = vmatprep.mubr.bf16.mxu0 0
  %9680 = vmatmul.mubr.bf16.gmra.mxu0 %v9295
  %v9681 = vpop.f32.mrf.mxu0
  %v9682 = vpop.f32.mrf.mxu0
  %v9683 = vpop.f32.mrf.mxu0
  %v9684 = vpop.f32.mrf.mxu0
  %9685 = vmatprep.mubr.bf16.mxu0 0
  %9686 = vmatmul.mubr.bf16.gmra.mxu0 %v9298
  %v9687 = vpop.f32.mrf.mxu0
  %v9688 = vadd.f32 0.0, %v9687
  %v9689 = vpop.f32.mrf.mxu0
  %v9690 = vpop.f32.mrf.mxu0
  %v9691 = vadd.f32 0.0, %v9690
  %v9692 = vpop.f32.mrf.mxu0
  %9693 = vmatprep.mubr.bf16.mxu0 0
  %9694 = vmatmul.mubr.bf16.gmra.mxu0 %v9301
  %v9695 = vpop.f32.mrf.mxu0
  %v9696 = vadd.f32 0.0, %v9695
  %v9697 = vpop.f32.mrf.mxu0
  %v9698 = vpop.f32.mrf.mxu0
  %v9699 = vadd.f32 0.0, %v9698
  %v9700 = vpop.f32.mrf.mxu0
  %9701 = vmatprep.mubr.bf16.mxu0 0
  %9702 = vmatmul.mubr.bf16.gmra.mxu0 %v9304
  %v9703 = vpop.f32.mrf.mxu0
  %v9704 = vadd.f32 0.0, %v9703
  %v9705 = vpop.f32.mrf.mxu0
  %v9706 = vpop.f32.mrf.mxu0
  %v9707 = vadd.f32 0.0, %v9706
  %v9708 = vpop.f32.mrf.mxu0
  %9709 = vmatprep.mubr.bf16.mxu0 0
  %9710 = vmatmul.mubr.bf16.gmra.mxu0 %v9307
  %v9711 = vpop.f32.mrf.mxu0
  %v9712 = vadd.f32 0.0, %v9711
  %v9713 = vpop.f32.mrf.mxu0
  %v9714 = vpop.f32.mrf.mxu0
  %v9715 = vadd.f32 0.0, %v9714
  %v9716 = vpop.f32.mrf.mxu0
  %9717 = vmatprep.mubr.bf16.mxu0 0
  %9718 = vmatmul.mubr.bf16.gmra.mxu0 %v9310
  %v9719 = vpop.f32.mrf.mxu0
  %v9720 = vadd.f32 0.0, %v9719
  %v9721 = vpop.f32.mrf.mxu0
  %v9722 = vpop.f32.mrf.mxu0
  %v9723 = vadd.f32 0.0, %v9722
  %v9724 = vpop.f32.mrf.mxu0
  %9725 = vmatprep.mubr.bf16.mxu0 0
  %9726 = vmatmul.mubr.bf16.gmra.mxu0 %v9313
  %v9727 = vpop.f32.mrf.mxu0
  %v9728 = vadd.f32 0.0, %v9727
  %v9729 = vpop.f32.mrf.mxu0
  %v9730 = vpop.f32.mrf.mxu0
  %v9731 = vadd.f32 0.0, %v9730
  %v9732 = vpop.f32.mrf.mxu0
  %9733 = vmatprep.mubr.bf16.mxu0 0
  %9734 = vmatmul.mubr.bf16.gmra.mxu0 %v9316
  %v9735 = vpop.f32.mrf.mxu0
  %v9736 = vadd.f32 0.0, %v9735
  %v9737 = vpop.f32.mrf.mxu0
  %v9738 = vpop.f32.mrf.mxu0
  %v9739 = vadd.f32 0.0, %v9738
  %v9740 = vpop.f32.mrf.mxu0
  %9741 = vmatprep.mubr.bf16.mxu0 0
  %9742 = vmatmul.mubr.bf16.gmra.mxu0 %v9319
  %v9743 = vpop.f32.mrf.mxu0
  %v9744 = vpop.f32.mrf.mxu0
  %v9745 = vpop.f32.mrf.mxu0
  %v9746 = vpop.f32.mrf.mxu0
  %9747 = vmatprep.mubr.bf16.mxu0 0
  %9748 = vmatmul.mubr.bf16.gmra.mxu0 %v9322
  %v9749 = vpop.f32.mrf.mxu0
  %v9750 = vpop.f32.mrf.mxu0
  %v9751 = vpop.f32.mrf.mxu0
  %v9752 = vpop.f32.mrf.mxu0
  %9753 = vmatprep.mubr.bf16.mxu0 0
  %9754 = vmatmul.mubr.bf16.gmra.mxu0 %v9325
  %v9755 = vpop.f32.mrf.mxu0
  %v9756 = vadd.f32 0.0, %v9755
  %v9757 = vpop.f32.mrf.mxu0
  %v9758 = vpop.f32.mrf.mxu0
  %v9759 = vadd.f32 0.0, %v9758
  %v9760 = vpop.f32.mrf.mxu0
  %9761 = vmatprep.mubr.bf16.mxu0 0
  %9762 = vmatmul.mubr.bf16.gmra.mxu0 %v9328
  %v9763 = vpop.f32.mrf.mxu0
  %v9764 = vadd.f32 0.0, %v9763
  %v9765 = vpop.f32.mrf.mxu0
  %v9766 = vpop.f32.mrf.mxu0
  %v9767 = vadd.f32 0.0, %v9766
  %v9768 = vpop.f32.mrf.mxu0
  %9769 = vmatprep.mubr.bf16.mxu0 0
  %9770 = vmatmul.mubr.bf16.gmra.mxu0 %v9331
  %v9771 = vpop.f32.mrf.mxu0
  %v9772 = vadd.f32 0.0, %v9771
  %v9773 = vpop.f32.mrf.mxu0
  %v9774 = vpop.f32.mrf.mxu0
  %v9775 = vadd.f32 0.0, %v9774
  %v9776 = vpop.f32.mrf.mxu0
  %9777 = vmatprep.mubr.bf16.mxu0 0
  %9778 = vmatmul.mubr.bf16.gmra.mxu0 %v9334
  %v9779 = vpop.f32.mrf.mxu0
  %v9780 = vadd.f32 0.0, %v9779
  %v9781 = vpop.f32.mrf.mxu0
  %v9782 = vpop.f32.mrf.mxu0
  %v9783 = vadd.f32 0.0, %v9782
  %v9784 = vpop.f32.mrf.mxu0
  %9785 = vmatprep.mubr.bf16.mxu0 0
  %9786 = vmatmul.mubr.bf16.gmra.mxu0 %v9337
  %v9787 = vpop.f32.mrf.mxu0
  %v9788 = vadd.f32 0.0, %v9787
  %v9789 = vpop.f32.mrf.mxu0
  %v9790 = vpop.f32.mrf.mxu0
  %v9791 = vadd.f32 0.0, %v9790
  %v9792 = vpop.f32.mrf.mxu0
  %9793 = vmatprep.mubr.bf16.mxu0 0
  %9794 = vmatmul.mubr.bf16.gmra.mxu0 %v9340
  %v9795 = vpop.f32.mrf.mxu0
  %v9796 = vadd.f32 0.0, %v9795
  %v9797 = vpop.f32.mrf.mxu0
  %v9798 = vpop.f32.mrf.mxu0
  %v9799 = vadd.f32 0.0, %v9798
  %v9800 = vpop.f32.mrf.mxu0
  %9801 = vmatprep.mubr.bf16.mxu0 0
  %9802 = vmatmul.mubr.bf16.gmra.mxu0 %v9343
  %v9803 = vpop.f32.mrf.mxu0
  %v9804 = vadd.f32 0.0, %v9803
  %v9805 = vpop.f32.mrf.mxu0
  %v9806 = vpop.f32.mrf.mxu0
  %v9807 = vadd.f32 0.0, %v9806
  %v9808 = vpop.f32.mrf.mxu0
  %9809 = vmatprep.mubr.bf16.mxu0 0
  %9810 = vmatmul.mubr.bf16.gmra.mxu0 %v9346
  %v9811 = vpop.f32.mrf.mxu0
  %v9812 = vpop.f32.mrf.mxu0
  %v9813 = vpop.f32.mrf.mxu0
  %v9814 = vpop.f32.mrf.mxu0
  %9815 = vmatprep.mubr.bf16.mxu0 0
  %9816 = vmatmul.mubr.bf16.gmra.mxu0 %v9349
  %v9817 = vpop.f32.mrf.mxu0
  %v9818 = vpop.f32.mrf.mxu0
  %v9819 = vpop.f32.mrf.mxu0
  %v9820 = vpop.f32.mrf.mxu0
  %9821 = vmatprep.mubr.bf16.mxu0 0
  %9822 = vmatmul.mubr.bf16.gmra.mxu0 %v9352
  %v9823 = vpop.f32.mrf.mxu0
  %v9824 = vadd.f32 0.0, %v9823
  %v9825 = vpop.f32.mrf.mxu0
  %v9826 = vpop.f32.mrf.mxu0
  %v9827 = vadd.f32 0.0, %v9826
  %v9828 = vpop.f32.mrf.mxu0
  %9829 = vmatprep.mubr.bf16.mxu0 0
  %9830 = vmatmul.mubr.bf16.gmra.mxu0 %v9355
  %v9831 = vpop.f32.mrf.mxu0
  %v9832 = vadd.f32 0.0, %v9831
  %v9833 = vpop.f32.mrf.mxu0
  %v9834 = vpop.f32.mrf.mxu0
  %v9835 = vadd.f32 0.0, %v9834
  %v9836 = vpop.f32.mrf.mxu0
  %9837 = vmatprep.mubr.bf16.mxu0 0
  %9838 = vmatmul.mubr.bf16.gmra.mxu0 %v9358
  %v9839 = vpop.f32.mrf.mxu0
  %v9840 = vadd.f32 0.0, %v9839
  %v9841 = vpop.f32.mrf.mxu0
  %v9842 = vpop.f32.mrf.mxu0
  %v9843 = vadd.f32 0.0, %v9842
  %v9844 = vpop.f32.mrf.mxu0
  %9845 = vmatprep.mubr.bf16.mxu0 0
  %9846 = vmatmul.mubr.bf16.gmra.mxu0 %v9361
  %v9847 = vpop.f32.mrf.mxu0
  %v9848 = vadd.f32 0.0, %v9847
  %v9849 = vpop.f32.mrf.mxu0
  %v9850 = vpop.f32.mrf.mxu0
  %v9851 = vadd.f32 0.0, %v9850
  %v9852 = vpop.f32.mrf.mxu0
  %9853 = vmatprep.mubr.bf16.mxu0 0
  %9854 = vmatmul.mubr.bf16.gmra.mxu0 %v9364
  %v9855 = vpop.f32.mrf.mxu0
  %v9856 = vadd.f32 0.0, %v9855
  %v9857 = vpop.f32.mrf.mxu0
  %v9858 = vpop.f32.mrf.mxu0
  %v9859 = vadd.f32 0.0, %v9858
  %v9860 = vpop.f32.mrf.mxu0
  %9861 = vmatprep.mubr.bf16.mxu0 0
  %9862 = vmatmul.mubr.bf16.gmra.mxu0 %v9367
  %v9863 = vpop.f32.mrf.mxu0
  %v9864 = vadd.f32 0.0, %v9863
  %v9865 = vpop.f32.mrf.mxu0
  %v9866 = vpop.f32.mrf.mxu0
  %v9867 = vadd.f32 0.0, %v9866
  %v9868 = vpop.f32.mrf.mxu0
  %9869 = vmatprep.mubr.bf16.mxu0 0
  %9870 = vmatmul.mubr.bf16.gmra.mxu0 %v9370
  %v9871 = vpop.f32.mrf.mxu0
  %v9872 = vadd.f32 0.0, %v9871
  %v9873 = vpop.f32.mrf.mxu0
  %v9874 = vpop.f32.mrf.mxu0
  %v9875 = vadd.f32 0.0, %v9874
  %v9876 = vpop.f32.mrf.mxu0
  %9877 = vmatprep.mubr.bf16.mxu0 0
  %9878 = vmatmul.mubr.bf16.gmra.mxu0 %v9373
  %v9879 = vpop.f32.mrf.mxu0
  %v9880 = vpop.f32.mrf.mxu0
  %v9881 = vpop.f32.mrf.mxu0
  %v9882 = vpop.f32.mrf.mxu0
  %9883 = vmatprep.mubr.bf16.mxu0 0
  %9884 = vmatmul.mubr.bf16.gmra.mxu0 %v9376
  %v9885 = vpop.f32.mrf.mxu0
  %v9886 = vpop.f32.mrf.mxu0
  %v9887 = vpop.f32.mrf.mxu0
  %v9888 = vpop.f32.mrf.mxu0
  %9889 = vmatprep.mubr.bf16.mxu0 0
  %9890 = vmatmul.mubr.bf16.gmra.mxu0 %v9379
  %v9891 = vpop.f32.mrf.mxu0
  %v9892 = vpop.f32.mrf.mxu0
  %v9893 = vpop.f32.mrf.mxu0
  %v9894 = vpop.f32.mrf.mxu0
  %9895 = vdwg.mxu0
  %v9896 = vadd.f32 %v8625, %v9416
  %v9897 = vadd.f32 %v8626, %v9419
  %v9898 = vadd.f32 %v8627, %v9424
  %v9899 = vadd.f32 %v8628, %v9427
  %v9900 = vadd.f32 %v8629, %v9432
  %v9901 = vadd.f32 %v8630, %v9435
  %v9902 = vadd.f32 %v8631, %v9440
  %v9903 = vadd.f32 %v8632, %v9443
  %v9904 = vadd.f32 %v8633, %v9448
  %v9905 = vadd.f32 %v8634, %v9451
  %v9906 = vadd.f32 %v8635, %v9456
  %v9907 = vadd.f32 %v8636, %v9459
  %v9908 = vadd.f32 %v8637, %v9464
  %v9909 = vadd.f32 %v8638, %v9467
  %v9910 = vadd.f32 %v8639, %v9484
  %v9911 = vadd.f32 %v8640, %v9487
  %v9912 = vadd.f32 %v8641, %v9492
  %v9913 = vadd.f32 %v8642, %v9495
  %v9914 = vadd.f32 %v8643, %v9500
  %v9915 = vadd.f32 %v8644, %v9503
  %v9916 = vadd.f32 %v8645, %v9508
  %v9917 = vadd.f32 %v8646, %v9511
  %v9918 = vadd.f32 %v8647, %v9516
  %v9919 = vadd.f32 %v8648, %v9519
  %v9920 = vadd.f32 %v8649, %v9524
  %v9921 = vadd.f32 %v8650, %v9527
  %v9922 = vadd.f32 %v8651, %v9532
  %v9923 = vadd.f32 %v8652, %v9535
  %v9924 = vadd.f32 %v8653, %v9552
  %v9925 = vadd.f32 %v8654, %v9555
  %v9926 = vadd.f32 %v8655, %v9560
  %v9927 = vadd.f32 %v8656, %v9563
  %v9928 = vadd.f32 %v8657, %v9568
  %v9929 = vadd.f32 %v8658, %v9571
  %v9930 = vadd.f32 %v8659, %v9576
  %v9931 = vadd.f32 %v8660, %v9579
  %v9932 = vadd.f32 %v8661, %v9584
  %v9933 = vadd.f32 %v8662, %v9587
  %v9934 = vadd.f32 %v8663, %v9592
  %v9935 = vadd.f32 %v8664, %v9595
  %v9936 = vadd.f32 %v8665, %v9600
  %v9937 = vadd.f32 %v8666, %v9603
  %v9938 = vadd.f32 %v8667, %v9620
  %v9939 = vadd.f32 %v8668, %v9623
  %v9940 = vadd.f32 %v8669, %v9628
  %v9941 = vadd.f32 %v8670, %v9631
  %v9942 = vadd.f32 %v8671, %v9636
  %v9943 = vadd.f32 %v8672, %v9639
  %v9944 = vadd.f32 %v8673, %v9644
  %v9945 = vadd.f32 %v8674, %v9647
  %v9946 = vadd.f32 %v8675, %v9652
  %v9947 = vadd.f32 %v8676, %v9655
  %v9948 = vadd.f32 %v8677, %v9660
  %v9949 = vadd.f32 %v8678, %v9663
  %v9950 = vadd.f32 %v8679, %v9668
  %v9951 = vadd.f32 %v8680, %v9671
  %v9952 = vadd.f32 %v8681, %v9688
  %v9953 = vadd.f32 %v8682, %v9691
  %v9954 = vadd.f32 %v8683, %v9696
  %v9955 = vadd.f32 %v8684, %v9699
  %v9956 = vadd.f32 %v8685, %v9704
  %v9957 = vadd.f32 %v8686, %v9707
  %v9958 = vadd.f32 %v8687, %v9712
  %v9959 = vadd.f32 %v8688, %v9715
  %v9960 = vadd.f32 %v8689, %v9720
  %v9961 = vadd.f32 %v8690, %v9723
  %v9962 = vadd.f32 %v8691, %v9728
  %v9963 = vadd.f32 %v8692, %v9731
  %v9964 = vadd.f32 %v8693, %v9736
  %v9965 = vadd.f32 %v8694, %v9739
  %v9966 = vadd.f32 %v8695, %v9756
  %v9967 = vadd.f32 %v8696, %v9759
  %v9968 = vadd.f32 %v8697, %v9764
  %v9969 = vadd.f32 %v8698, %v9767
  %v9970 = vadd.f32 %v8699, %v9772
  %v9971 = vadd.f32 %v8700, %v9775
  %v9972 = vadd.f32 %v8701, %v9780
  %v9973 = vadd.f32 %v8702, %v9783
  %v9974 = vadd.f32 %v8703, %v9788
  %v9975 = vadd.f32 %v8704, %v9791
  %v9976 = vadd.f32 %v8705, %v9796
  %v9977 = vadd.f32 %v8706, %v9799
  %v9978 = vadd.f32 %v8707, %v9804
  %v9979 = vadd.f32 %v8708, %v9807
  %v9980 = vadd.f32 %v8709, %v9824
  %v9981 = vadd.f32 %v8710, %v9827
  %v9982 = vadd.f32 %v8711, %v9832
  %v9983 = vadd.f32 %v8712, %v9835
  %v9984 = vadd.f32 %v8713, %v9840
  %v9985 = vadd.f32 %v8714, %v9843
  %v9986 = vadd.f32 %v8715, %v9848
  %v9987 = vadd.f32 %v8716, %v9851
  %v9988 = vadd.f32 %v8717, %v9856
  %v9989 = vadd.f32 %v8718, %v9859
  %v9990 = vadd.f32 %v8719, %v9864
  %v9991 = vadd.f32 %v8720, %v9867
  %v9992 = vadd.f32 %v8721, %v9872
  %v9993 = vadd.f32 %v8722, %v9875
  %s9994 = scalar_lea.vmem %s0, 160
  %v9995 = vld [vmem:[%s9994] sm:$0xf]
  %v9996 = vld [vmem:[%s9994 + $0x4] sm:$0xf]
  %v9997 = vld [vmem:[%s9994 + $0x8] sm:$0xf]
  %v9998 = vld [vmem:[%s9994 + $0xc] sm:$0xf]
  %v9999 = vld [vmem:[%s9994 + $0x10] sm:$0xf]
  %v10000 = vld [vmem:[%s9994 + $0x14] sm:$0xf]
  %v10001 = vld [vmem:[%s9994 + $0x18] sm:$0xf]
  %v10002 = vld [vmem:[%s9994 + $0x1c] sm:$0xf]
  %v10003 = vld [vmem:[%s9994 + $0x20] sm:$0xf]
  %v10004 = vld [vmem:[%s9994 + $0x24] sm:$0xf]
  %v10005 = vld [vmem:[%s9994 + $0x28] sm:$0xf]
  %v10006 = vld [vmem:[%s9994 + $0x2c] sm:$0xf]
  %v10007 = vld [vmem:[%s9994 + $0x30] sm:$0xf]
  %v10008 = vld [vmem:[%s9994 + $0x34] sm:$0xf]
  %v10009 = vld [vmem:[%s9994 + $0x38] sm:$0xf]
  %v10010 = vld [vmem:[%s9994 + $0x3c] sm:$0xf]
  %v10011 = vld [vmem:[%s9994 + $0x40] sm:$0xf]
  %v10012 = vld [vmem:[%s9994 + $0x44] sm:$0xf]
  %v10013 = vld [vmem:[%s9994 + $0x48] sm:$0xf]
  %v10014 = vld [vmem:[%s9994 + $0x4c] sm:$0xf]
  %v10015 = vld [vmem:[%s9994 + $0x50] sm:$0xf]
  %v10016 = vld [vmem:[%s9994 + $0x54] sm:$0xf]
  %v10017 = vld [vmem:[%s9994 + $0x58] sm:$0xf]
  %v10018 = vld [vmem:[%s9994 + $0x5c] sm:$0xf]
  %v10019 = vld [vmem:[%s9994 + $0x60] sm:$0xf]
  %v10020 = vld [vmem:[%s9994 + $0x64] sm:$0xf]
  %v10021 = vld [vmem:[%s9994 + $0x68] sm:$0xf]
  %v10022 = vld [vmem:[%s9994 + $0x6c] sm:$0xf]
  %v10023 = vld [vmem:[%s9994 + $0x70] sm:$0xf]
  %v10024 = vld [vmem:[%s9994 + $0x74] sm:$0xf]
  %v10025 = vld [vmem:[%s9994 + $0x78] sm:$0xf]
  %v10026 = vld [vmem:[%s9994 + $0x7c] sm:$0xf]
  %v10027 = vld [vmem:[%s9994 + $0x80] sm:$0xf]
  %v10028 = vld [vmem:[%s9994 + $0x84] sm:$0xf]
  %v10029 = vld [vmem:[%s9994 + $0x88] sm:$0xf]
  %v10030 = vld [vmem:[%s9994 + $0x8c] sm:$0xf]
  %v10031 = vld [vmem:[%s9994 + $0x90] sm:$0xf]
  %v10032 = vld [vmem:[%s9994 + $0x94] sm:$0xf]
  %v10033 = vld [vmem:[%s9994 + $0x98] sm:$0xf]
  %v10034 = vld [vmem:[%s9994 + $0x9c] sm:$0xf]
  %v10035 = vld [vmem:[%s9994 + $0xa0] sm:$0xf]
  %v10036 = vld [vmem:[%s9994 + $0xa4] sm:$0xf]
  %v10037 = vld [vmem:[%s9994 + $0xa8] sm:$0xf]
  %v10038 = vld [vmem:[%s9994 + $0xac] sm:$0xf]
  %v10039 = vld [vmem:[%s9994 + $0xb0] sm:$0xf]
  %v10040 = vld [vmem:[%s9994 + $0xb4] sm:$0xf]
  %v10041 = vld [vmem:[%s9994 + $0xb8] sm:$0xf]
  %v10042 = vld [vmem:[%s9994 + $0xbc] sm:$0xf]
  %v10043 = vld [vmem:[%s9994 + $0xc0] sm:$0xf]
  %v10044 = vld [vmem:[%s9994 + $0xc4] sm:$0xf]
  %v10045 = vld [vmem:[%s9994 + $0xc8] sm:$0xf]
  %v10046 = vld [vmem:[%s9994 + $0xcc] sm:$0xf]
  %v10047 = vld [vmem:[%s9994 + $0xd0] sm:$0xf]
  %v10048 = vld [vmem:[%s9994 + $0xd4] sm:$0xf]
  %v10049 = vld [vmem:[%s9994 + $0xd8] sm:$0xf]
  %v10050 = vld [vmem:[%s9994 + $0xdc] sm:$0xf]
  %v10051 = vld [vmem:[%s9994 + $0xe0] sm:$0xf]
  %v10052 = vld [vmem:[%s9994 + $0xe4] sm:$0xf]
  %v10053 = vld [vmem:[%s9994 + $0xe8] sm:$0xf]
  %v10054 = vld [vmem:[%s9994 + $0xec] sm:$0xf]
  %v10055 = vld [vmem:[%s9994 + $0xf0] sm:$0xf]
  %v10056 = vld [vmem:[%s9994 + $0xf4] sm:$0xf]
  %v10057 = vld [vmem:[%s9994 + $0xf8] sm:$0xf]
  %v10058 = vld [vmem:[%s9994 + $0xfc] sm:$0xf]
  %v10059 = vld [vmem:[%s9994 + $0x100] sm:$0xf]
  %v10060 = vld [vmem:[%s9994 + $0x104] sm:$0xf]
  %v10061 = vld [vmem:[%s9994 + $0x108] sm:$0xf]
  %v10062 = vld [vmem:[%s9994 + $0x10c] sm:$0xf]
  %v10063 = vld [vmem:[%s9994 + $0x110] sm:$0xf]
  %v10064 = vld [vmem:[%s9994 + $0x114] sm:$0xf]
  %v10065 = vld [vmem:[%s9994 + $0x118] sm:$0xf]
  %v10066 = vld [vmem:[%s9994 + $0x11c] sm:$0xf]
  %v10067 = vld [vmem:[%s9994 + $0x120] sm:$0xf]
  %v10068 = vld [vmem:[%s9994 + $0x124] sm:$0xf]
  %v10069 = vld [vmem:[%s9994 + $0x128] sm:$0xf]
  %v10070 = vld [vmem:[%s9994 + $0x12c] sm:$0xf]
  %v10071 = vld [vmem:[%s9994 + $0x130] sm:$0xf]
  %v10072 = vld [vmem:[%s9994 + $0x134] sm:$0xf]
  %v10073 = vld [vmem:[%s9994 + $0x138] sm:$0xf]
  %v10074 = vld [vmem:[%s9994 + $0x13c] sm:$0xf]
  %v10075 = vld [vmem:[%s9994 + $0x140] sm:$0xf]
  %v10076 = vld [vmem:[%s9994 + $0x144] sm:$0xf]
  %v10077 = vld [vmem:[%s9994 + $0x148] sm:$0xf]
  %v10078 = vld [vmem:[%s9994 + $0x14c] sm:$0xf]
  %v10079 = vld [vmem:[%s9994 + $0x150] sm:$0xf]
  %v10080 = vld [vmem:[%s9994 + $0x154] sm:$0xf]
  %v10081 = vld [vmem:[%s9994 + $0x158] sm:$0xf]
  %v10082 = vld [vmem:[%s9994 + $0x15c] sm:$0xf]
  %v10083 = vld [vmem:[%s9994 + $0x160] sm:$0xf]
  %v10084 = vld [vmem:[%s9994 + $0x164] sm:$0xf]
  %v10085 = vld [vmem:[%s9994 + $0x168] sm:$0xf]
  %v10086 = vld [vmem:[%s9994 + $0x16c] sm:$0xf]
  %v10087 = vld [vmem:[%s9994 + $0x170] sm:$0xf]
  %v10088 = vld [vmem:[%s9994 + $0x174] sm:$0xf]
  %v10089 = vld [vmem:[%s9994 + $0x178] sm:$0xf]
  %v10090 = vld [vmem:[%s9994 + $0x17c] sm:$0xf]
  %v10091 = vld [vmem:[%s9994 + $0x180] sm:$0xf]
  %v10092 = vld [vmem:[%s9994 + $0x184] sm:$0xf]
  %v10093 = vld [vmem:[%s9994 + $0x188] sm:$0xf]
  %v10094 = vld [vmem:[%s9994 + $0x18c] sm:$0xf]
  %v10095 = vld [vmem:[%s9994 + $0x190] sm:$0xf]
  %v10096 = vld [vmem:[%s9994 + $0x194] sm:$0xf]
  %v10097 = vld [vmem:[%s9994 + $0x198] sm:$0xf]
  %v10098 = vld [vmem:[%s9994 + $0x19c] sm:$0xf]
  %v10099 = vld [vmem:[%s9994 + $0x1a0] sm:$0xf]
  %v10100 = vld [vmem:[%s9994 + $0x1a4] sm:$0xf]
  %v10101 = vld [vmem:[%s9994 + $0x1a8] sm:$0xf]
  %v10102 = vld [vmem:[%s9994 + $0x1ac] sm:$0xf]
  %v10103 = vld [vmem:[%s9994 + $0x1b0] sm:$0xf]
  %v10104 = vld [vmem:[%s9994 + $0x1b4] sm:$0xf]
  %v10105 = vld [vmem:[%s9994 + $0x1b8] sm:$0xf]
  %v10106 = vld [vmem:[%s9994 + $0x1bc] sm:$0xf]
  %v10107 = vld [vmem:[%s9994 + $0x1c0] sm:$0xf]
  %v10108 = vld [vmem:[%s9994 + $0x1c4] sm:$0xf]
  %v10109 = vld [vmem:[%s9994 + $0x1c8] sm:$0xf]
  %v10110 = vld [vmem:[%s9994 + $0x1cc] sm:$0xf]
  %v10111 = vld [vmem:[%s9994 + $0x1d0] sm:$0xf]
  %v10112 = vld [vmem:[%s9994 + $0x1d4] sm:$0xf]
  %v10113 = vld [vmem:[%s9994 + $0x1d8] sm:$0xf]
  %v10114 = vld [vmem:[%s9994 + $0x1dc] sm:$0xf]
  %v10115 = vld [vmem:[%s9994 + $0x1e0] sm:$0xf]
  %v10116 = vld [vmem:[%s9994 + $0x1e4] sm:$0xf]
  %v10117 = vld [vmem:[%s9994 + $0x1e8] sm:$0xf]
  %v10118 = vld [vmem:[%s9994 + $0x1ec] sm:$0xf]
  %v10119 = vld [vmem:[%s9994 + $0x1f0] sm:$0xf]
  %v10120 = vld [vmem:[%s9994 + $0x1f4] sm:$0xf]
  %v10121 = vld [vmem:[%s9994 + $0x1f8] sm:$0xf]
  %v10122 = vld [vmem:[%s9994 + $0x1fc] sm:$0xf]
  %s10123 = scalar_lea.vmem %s1, 128
  %v10124 = vld [vmem:[%s10123] sm:$0xf]
  %v10125 = vld [vmem:[%s10123 + $0x4] sm:$0xf]
  %v10126 = vld [vmem:[%s10123 + $0x8] sm:$0xf]
  %v10127 = vld [vmem:[%s10123 + $0xc] sm:$0xf]
  %v10256 = vunpack.c.l.b16 %v9995
  %v10257 = vunpack.c.l.b16 %v9996
  %v10258 = vunpack.c.l.b16 %v9997
  %v10259 = vunpack.c.l.b16 %v9998
  %v10260 = vunpack.c.l.b16 %v9999
  %v10261 = vunpack.c.l.b16 %v10000
  %v10262 = vunpack.c.l.b16 %v10001
  %v10263 = vunpack.c.l.b16 %v10002
  %v10264 = vunpack.c.l.b16 %v10003
  %v10265 = vunpack.c.l.b16 %v10004
  %v10266 = vunpack.c.l.b16 %v10005
  %v10267 = vunpack.c.l.b16 %v10006
  %v10268 = vunpack.c.l.b16 %v10007
  %v10269 = vunpack.c.l.b16 %v10008
  %v10270 = vunpack.c.l.b16 %v10009
  %v10271 = vunpack.c.l.b16 %v10010
  %v10272 = vunpack.c.l.b16 %v10011
  %v10273 = vunpack.c.l.b16 %v10012
  %v10274 = vunpack.c.l.b16 %v10013
  %v10275 = vunpack.c.l.b16 %v10014
  %v10276 = vunpack.c.l.b16 %v10015
  %v10277 = vunpack.c.l.b16 %v10016
  %v10278 = vunpack.c.l.b16 %v10017
  %v10279 = vunpack.c.l.b16 %v10018
  %v10280 = vunpack.c.l.b16 %v10019
  %v10281 = vunpack.c.l.b16 %v10020
  %v10282 = vunpack.c.l.b16 %v10021
  %v10283 = vunpack.c.l.b16 %v10022
  %v10284 = vunpack.c.l.b16 %v10023
  %v10285 = vunpack.c.l.b16 %v10024
  %v10286 = vunpack.c.l.b16 %v10025
  %v10287 = vunpack.c.l.b16 %v10026
  %v10288 = vunpack.c.l.b16 %v10027
  %v10289 = vunpack.c.l.b16 %v10028
  %v10290 = vunpack.c.l.b16 %v10029
  %v10291 = vunpack.c.l.b16 %v10030
  %v10292 = vunpack.c.l.b16 %v10031
  %v10293 = vunpack.c.l.b16 %v10032
  %v10294 = vunpack.c.l.b16 %v10033
  %v10295 = vunpack.c.l.b16 %v10034
  %v10296 = vunpack.c.l.b16 %v10035
  %v10297 = vunpack.c.l.b16 %v10036
  %v10298 = vunpack.c.l.b16 %v10037
  %v10299 = vunpack.c.l.b16 %v10038
  %v10300 = vunpack.c.l.b16 %v10039
  %v10301 = vunpack.c.l.b16 %v10040
  %v10302 = vunpack.c.l.b16 %v10041
  %v10303 = vunpack.c.l.b16 %v10042
  %v10304 = vunpack.c.l.b16 %v10043
  %v10305 = vunpack.c.l.b16 %v10044
  %v10306 = vunpack.c.l.b16 %v10045
  %v10307 = vunpack.c.l.b16 %v10046
  %v10308 = vunpack.c.l.b16 %v10047
  %v10309 = vunpack.c.l.b16 %v10048
  %v10310 = vunpack.c.l.b16 %v10049
  %v10311 = vunpack.c.l.b16 %v10050
  %v10312 = vunpack.c.l.b16 %v10051
  %v10313 = vunpack.c.l.b16 %v10052
  %v10314 = vunpack.c.l.b16 %v10053
  %v10315 = vunpack.c.l.b16 %v10054
  %v10316 = vunpack.c.l.b16 %v10055
  %v10317 = vunpack.c.l.b16 %v10056
  %v10318 = vunpack.c.l.b16 %v10057
  %v10319 = vunpack.c.l.b16 %v10058
  %v10320 = vunpack.c.l.b16 %v10059
  %v10321 = vunpack.c.l.b16 %v10060
  %v10322 = vunpack.c.l.b16 %v10061
  %v10323 = vunpack.c.l.b16 %v10062
  %v10324 = vunpack.c.l.b16 %v10063
  %v10325 = vunpack.c.l.b16 %v10064
  %v10326 = vunpack.c.l.b16 %v10065
  %v10327 = vunpack.c.l.b16 %v10066
  %v10328 = vunpack.c.l.b16 %v10067
  %v10329 = vunpack.c.l.b16 %v10068
  %v10330 = vunpack.c.l.b16 %v10069
  %v10331 = vunpack.c.l.b16 %v10070
  %v10332 = vunpack.c.l.b16 %v10071
  %v10333 = vunpack.c.l.b16 %v10072
  %v10334 = vunpack.c.l.b16 %v10073
  %v10335 = vunpack.c.l.b16 %v10074
  %v10336 = vunpack.c.l.b16 %v10075
  %v10337 = vunpack.c.l.b16 %v10076
  %v10338 = vunpack.c.l.b16 %v10077
  %v10339 = vunpack.c.l.b16 %v10078
  %v10340 = vunpack.c.l.b16 %v10079
  %v10341 = vunpack.c.l.b16 %v10080
  %v10342 = vunpack.c.l.b16 %v10081
  %v10343 = vunpack.c.l.b16 %v10082
  %v10344 = vunpack.c.l.b16 %v10083
  %v10345 = vunpack.c.l.b16 %v10084
  %v10346 = vunpack.c.l.b16 %v10085
  %v10347 = vunpack.c.l.b16 %v10086
  %v10348 = vunpack.c.l.b16 %v10087
  %v10349 = vunpack.c.l.b16 %v10088
  %v10350 = vunpack.c.l.b16 %v10089
  %v10351 = vunpack.c.l.b16 %v10090
  %v10352 = vunpack.c.l.b16 %v10091
  %v10353 = vunpack.c.l.b16 %v10092
  %v10354 = vunpack.c.l.b16 %v10093
  %v10355 = vunpack.c.l.b16 %v10094
  %v10356 = vunpack.c.l.b16 %v10095
  %v10357 = vunpack.c.l.b16 %v10096
  %v10358 = vunpack.c.l.b16 %v10097
  %v10359 = vunpack.c.l.b16 %v10098
  %v10360 = vunpack.c.l.b16 %v10099
  %v10361 = vunpack.c.l.b16 %v10100
  %v10362 = vunpack.c.l.b16 %v10101
  %v10363 = vunpack.c.l.b16 %v10102
  %v10364 = vunpack.c.l.b16 %v10103
  %v10365 = vunpack.c.l.b16 %v10104
  %v10366 = vunpack.c.l.b16 %v10105
  %v10367 = vunpack.c.l.b16 %v10106
  %v10368 = vunpack.c.l.b16 %v10107
  %v10369 = vunpack.c.l.b16 %v10108
  %v10370 = vunpack.c.l.b16 %v10109
  %v10371 = vunpack.c.l.b16 %v10110
  %v10372 = vunpack.c.l.b16 %v10111
  %v10373 = vunpack.c.l.b16 %v10112
  %v10374 = vunpack.c.l.b16 %v10113
  %v10375 = vunpack.c.l.b16 %v10114
  %v10376 = vunpack.c.l.b16 %v10115
  %v10377 = vunpack.c.l.b16 %v10116
  %v10378 = vunpack.c.l.b16 %v10117
  %v10379 = vunpack.c.l.b16 %v10118
  %v10380 = vunpack.c.l.b16 %v10119
  %v10381 = vunpack.c.l.b16 %v10120
  %v10382 = vunpack.c.l.b16 %v10121
  %v10383 = vunpack.c.l.b16 %v10122
  %v10384 = vpack.c.b16 %v10257, %v10256
  %v10385 = vpack.c.b16 %v10259, %v10258
  %v10386 = vpack.c.b16 %v10261, %v10260
  %v10387 = vpack.c.b16 %v10263, %v10262
  %v10388 = vpack.c.b16 %v10265, %v10264
  %v10389 = vpack.c.b16 %v10267, %v10266
  %v10390 = vpack.c.b16 %v10269, %v10268
  %v10391 = vpack.c.b16 %v10271, %v10270
  %v10392 = vpack.c.b16 %v10273, %v10272
  %v10393 = vpack.c.b16 %v10275, %v10274
  %v10394 = vpack.c.b16 %v10277, %v10276
  %v10395 = vpack.c.b16 %v10279, %v10278
  %v10396 = vpack.c.b16 %v10281, %v10280
  %v10397 = vpack.c.b16 %v10283, %v10282
  %v10398 = vpack.c.b16 %v10285, %v10284
  %v10399 = vpack.c.b16 %v10287, %v10286
  %v10400 = vpack.c.b16 %v10289, %v10288
  %v10401 = vpack.c.b16 %v10291, %v10290
  %v10402 = vpack.c.b16 %v10293, %v10292
  %v10403 = vpack.c.b16 %v10295, %v10294
  %v10404 = vpack.c.b16 %v10297, %v10296
  %v10405 = vpack.c.b16 %v10299, %v10298
  %v10406 = vpack.c.b16 %v10301, %v10300
  %v10407 = vpack.c.b16 %v10303, %v10302
  %v10408 = vpack.c.b16 %v10305, %v10304
  %v10409 = vpack.c.b16 %v10307, %v10306
  %v10410 = vpack.c.b16 %v10309, %v10308
  %v10411 = vpack.c.b16 %v10311, %v10310
  %v10412 = vpack.c.b16 %v10313, %v10312
  %v10413 = vpack.c.b16 %v10315, %v10314
  %v10414 = vpack.c.b16 %v10317, %v10316
  %v10415 = vpack.c.b16 %v10319, %v10318
  %v10416 = vpack.c.b16 %v10321, %v10320
  %v10417 = vpack.c.b16 %v10323, %v10322
  %v10418 = vpack.c.b16 %v10325, %v10324
  %v10419 = vpack.c.b16 %v10327, %v10326
  %v10420 = vpack.c.b16 %v10329, %v10328
  %v10421 = vpack.c.b16 %v10331, %v10330
  %v10422 = vpack.c.b16 %v10333, %v10332
  %v10423 = vpack.c.b16 %v10335, %v10334
  %v10424 = vpack.c.b16 %v10337, %v10336
  %v10425 = vpack.c.b16 %v10339, %v10338
  %v10426 = vpack.c.b16 %v10341, %v10340
  %v10427 = vpack.c.b16 %v10343, %v10342
  %v10428 = vpack.c.b16 %v10345, %v10344
  %v10429 = vpack.c.b16 %v10347, %v10346
  %v10430 = vpack.c.b16 %v10349, %v10348
  %v10431 = vpack.c.b16 %v10351, %v10350
  %v10432 = vpack.c.b16 %v10353, %v10352
  %v10433 = vpack.c.b16 %v10355, %v10354
  %v10434 = vpack.c.b16 %v10357, %v10356
  %v10435 = vpack.c.b16 %v10359, %v10358
  %v10436 = vpack.c.b16 %v10361, %v10360
  %v10437 = vpack.c.b16 %v10363, %v10362
  %v10438 = vpack.c.b16 %v10365, %v10364
  %v10439 = vpack.c.b16 %v10367, %v10366
  %v10440 = vpack.c.b16 %v10369, %v10368
  %v10441 = vpack.c.b16 %v10371, %v10370
  %v10442 = vpack.c.b16 %v10373, %v10372
  %v10443 = vpack.c.b16 %v10375, %v10374
  %v10444 = vpack.c.b16 %v10377, %v10376
  %v10445 = vpack.c.b16 %v10379, %v10378
  %v10446 = vpack.c.b16 %v10381, %v10380
  %v10447 = vpack.c.b16 %v10383, %v10382
  %v10452 = vunpack.c.l.b16 %v10124
  %v10453 = vunpack.c.l.b16 %v10125
  %v10454 = vunpack.c.l.b16 %v10126
  %v10455 = vunpack.c.l.b16 %v10127
  %v10456 = vpack.c.b16 %v10453, %v10452
  %v10457 = vpack.c.b16 %v10455, %v10454
  %v10461 = vsel %vm621, %v10384, 0
  %v10464 = vsel %vm621, %v10385, 0
  %v10467 = vsel %vm621, %v10386, 0
  %v10470 = vsel %vm621, %v10387, 0
  %v10473 = vsel %vm621, %v10388, 0
  %v10476 = vsel %vm621, %v10389, 0
  %v10479 = vsel %vm621, %v10390, 0
  %v10482 = vsel %vm621, %v10391, 0
  %v10485 = vsel %vm621, %v10392, 0
  %v10488 = vsel %vm621, %v10393, 0
  %v10491 = vsel %vm621, %v10394, 0
  %v10494 = vsel %vm621, %v10395, 0
  %v10497 = vsel %vm621, %v10396, 0
  %v10500 = vsel %vm621, %v10397, 0
  %v10503 = vsel %vm621, %v10398, 0
  %v10506 = vsel %vm621, %v10399, 0
  %v10509 = vsel %vm621, %v10400, 0
  %v10512 = vsel %vm621, %v10401, 0
  %v10515 = vsel %vm621, %v10402, 0
  %v10518 = vsel %vm621, %v10403, 0
  %v10521 = vsel %vm621, %v10404, 0
  %v10524 = vsel %vm621, %v10405, 0
  %v10527 = vsel %vm621, %v10406, 0
  %v10530 = vsel %vm621, %v10407, 0
  %v10533 = vsel %vm621, %v10408, 0
  %v10536 = vsel %vm621, %v10409, 0
  %v10539 = vsel %vm621, %v10410, 0
  %v10542 = vsel %vm621, %v10411, 0
  %v10545 = vsel %vm621, %v10412, 0
  %v10548 = vsel %vm621, %v10413, 0
  %v10551 = vsel %vm621, %v10414, 0
  %v10554 = vsel %vm621, %v10415, 0
  %v10557 = vsel %vm621, %v10416, 0
  %v10560 = vsel %vm621, %v10417, 0
  %v10563 = vsel %vm621, %v10418, 0
  %v10566 = vsel %vm621, %v10419, 0
  %v10569 = vsel %vm621, %v10420, 0
  %v10572 = vsel %vm621, %v10421, 0
  %v10575 = vsel %vm621, %v10422, 0
  %v10578 = vsel %vm621, %v10423, 0
  %v10581 = vsel %vm621, %v10424, 0
  %v10584 = vsel %vm621, %v10425, 0
  %v10587 = vsel %vm621, %v10426, 0
  %v10590 = vsel %vm621, %v10427, 0
  %v10593 = vsel %vm621, %v10428, 0
  %v10596 = vsel %vm621, %v10429, 0
  %v10599 = vsel %vm621, %v10430, 0
  %v10602 = vsel %vm621, %v10431, 0
  %v10605 = vsel %vm621, %v10432, 0
  %v10608 = vsel %vm621, %v10433, 0
  %v10611 = vsel %vm621, %v10434, 0
  %v10614 = vsel %vm621, %v10435, 0
  %v10617 = vsel %vm621, %v10436, 0
  %v10620 = vsel %vm621, %v10437, 0
  %v10623 = vsel %vm621, %v10438, 0
  %v10626 = vsel %vm621, %v10439, 0
  %v10629 = vsel %vm621, %v10440, 0
  %v10632 = vsel %vm621, %v10441, 0
  %v10635 = vsel %vm621, %v10442, 0
  %v10638 = vsel %vm621, %v10443, 0
  %v10641 = vsel %vm621, %v10444, 0
  %v10644 = vsel %vm621, %v10445, 0
  %v10647 = vsel %vm621, %v10446, 0
  %v10650 = vsel %vm621, %v10447, 0
  %10652 = vmatprep.subr.bf16.mxu0 0
  %10653 = vmatpush1.bf16.msra.mxu0 0
  %10654 = vmatprep.subr.bf16.mxu0 0
  %10655 = vmatpush1.bf16.msra.mxu0 0
  %10656 = vmatprep.subr.bf16.mxu0 0
  %10657 = vmatpush1.bf16.msra.mxu0 0
  %10658 = vmatprep.subr.bf16.mxu0 0
  %10659 = vmatpush1.bf16.msra.mxu0 0
  %10660 = vmatprep.subr.bf16.mxu0 0
  %10661 = vmatpush1.bf16.msra.mxu0 0
  %10662 = vmatprep.subr.bf16.mxu0 0
  %10663 = vmatpush1.bf16.msra.mxu0 0
  %10664 = vmatprep.subr.bf16.mxu0 0
  %10665 = vmatpush1.bf16.msra.mxu0 %v10457
  %10666 = vmatprep.subr.bf16.mxu0 0
  %10667 = vmatpush1.bf16.msra.mxu0 %v10456
  %10668 = vmatprep.subr.bf16.mxu0 0
  %10669 = vmatpush2.bf16.msra.mxu0 0
  %10670 = vmatprep.subr.bf16.mxu0 0
  %10671 = vmatpush2.bf16.msra.mxu0 0
  %10672 = vmatprep.subr.bf16.mxu0 0
  %10673 = vmatpush2.bf16.msra.mxu0 0
  %10674 = vmatprep.subr.bf16.mxu0 0
  %10675 = vmatpush2.bf16.msra.mxu0 0
  %10676 = vmatprep.subr.bf16.mxu0 0
  %10677 = vmatpush2.bf16.msra.mxu0 0
  %10678 = vmatprep.subr.bf16.mxu0 0
  %10679 = vmatpush2.bf16.msra.mxu0 0
  %10680 = vmatprep.subr.bf16.mxu0 0
  %10681 = vmatpush2.bf16.msra.mxu0 0
  %10682 = vmatprep.subr.bf16.mxu0 0
  %10683 = vmatpush2.bf16.msra.mxu0 0
  %10684 = vmatprep.mubr.bf16.mxu0 0
  %10685 = vmatmul.mubr.bf16.gmra.mxu0 %v10461
  %v10686 = vpop.f32.mrf.mxu0
  %v10687 = vadd.f32 0.0, %v10686
  %v10688 = vpop.f32.mrf.mxu0
  %v10689 = vpop.f32.mrf.mxu0
  %v10690 = vadd.f32 0.0, %v10689
  %v10691 = vpop.f32.mrf.mxu0
  %10692 = vmatprep.mubr.bf16.mxu0 0
  %10693 = vmatmul.mubr.bf16.gmra.mxu0 %v10464
  %v10694 = vpop.f32.mrf.mxu0
  %v10695 = vadd.f32 0.0, %v10694
  %v10696 = vpop.f32.mrf.mxu0
  %v10697 = vpop.f32.mrf.mxu0
  %v10698 = vadd.f32 0.0, %v10697
  %v10699 = vpop.f32.mrf.mxu0
  %10700 = vmatprep.mubr.bf16.mxu0 0
  %10701 = vmatmul.mubr.bf16.gmra.mxu0 %v10467
  %v10702 = vpop.f32.mrf.mxu0
  %v10703 = vadd.f32 0.0, %v10702
  %v10704 = vpop.f32.mrf.mxu0
  %v10705 = vpop.f32.mrf.mxu0
  %v10706 = vadd.f32 0.0, %v10705
  %v10707 = vpop.f32.mrf.mxu0
  %10708 = vmatprep.mubr.bf16.mxu0 0
  %10709 = vmatmul.mubr.bf16.gmra.mxu0 %v10470
  %v10710 = vpop.f32.mrf.mxu0
  %v10711 = vadd.f32 0.0, %v10710
  %v10712 = vpop.f32.mrf.mxu0
  %v10713 = vpop.f32.mrf.mxu0
  %v10714 = vadd.f32 0.0, %v10713
  %v10715 = vpop.f32.mrf.mxu0
  %10716 = vmatprep.mubr.bf16.mxu0 0
  %10717 = vmatmul.mubr.bf16.gmra.mxu0 %v10473
  %v10718 = vpop.f32.mrf.mxu0
  %v10719 = vadd.f32 0.0, %v10718
  %v10720 = vpop.f32.mrf.mxu0
  %v10721 = vpop.f32.mrf.mxu0
  %v10722 = vadd.f32 0.0, %v10721
  %v10723 = vpop.f32.mrf.mxu0
  %10724 = vmatprep.mubr.bf16.mxu0 0
  %10725 = vmatmul.mubr.bf16.gmra.mxu0 %v10476
  %v10726 = vpop.f32.mrf.mxu0
  %v10727 = vadd.f32 0.0, %v10726
  %v10728 = vpop.f32.mrf.mxu0
  %v10729 = vpop.f32.mrf.mxu0
  %v10730 = vadd.f32 0.0, %v10729
  %v10731 = vpop.f32.mrf.mxu0
  %10732 = vmatprep.mubr.bf16.mxu0 0
  %10733 = vmatmul.mubr.bf16.gmra.mxu0 %v10479
  %v10734 = vpop.f32.mrf.mxu0
  %v10735 = vadd.f32 0.0, %v10734
  %v10736 = vpop.f32.mrf.mxu0
  %v10737 = vpop.f32.mrf.mxu0
  %v10738 = vadd.f32 0.0, %v10737
  %v10739 = vpop.f32.mrf.mxu0
  %10740 = vmatprep.mubr.bf16.mxu0 0
  %10741 = vmatmul.mubr.bf16.gmra.mxu0 %v10482
  %v10742 = vpop.f32.mrf.mxu0
  %v10743 = vpop.f32.mrf.mxu0
  %v10744 = vpop.f32.mrf.mxu0
  %v10745 = vpop.f32.mrf.mxu0
  %10746 = vmatprep.mubr.bf16.mxu0 0
  %10747 = vmatmul.mubr.bf16.gmra.mxu0 %v10485
  %v10748 = vpop.f32.mrf.mxu0
  %v10749 = vpop.f32.mrf.mxu0
  %v10750 = vpop.f32.mrf.mxu0
  %v10751 = vpop.f32.mrf.mxu0
  %10752 = vmatprep.mubr.bf16.mxu0 0
  %10753 = vmatmul.mubr.bf16.gmra.mxu0 %v10488
  %v10754 = vpop.f32.mrf.mxu0
  %v10755 = vadd.f32 0.0, %v10754
  %v10756 = vpop.f32.mrf.mxu0
  %v10757 = vpop.f32.mrf.mxu0
  %v10758 = vadd.f32 0.0, %v10757
  %v10759 = vpop.f32.mrf.mxu0
  %10760 = vmatprep.mubr.bf16.mxu0 0
  %10761 = vmatmul.mubr.bf16.gmra.mxu0 %v10491
  %v10762 = vpop.f32.mrf.mxu0
  %v10763 = vadd.f32 0.0, %v10762
  %v10764 = vpop.f32.mrf.mxu0
  %v10765 = vpop.f32.mrf.mxu0
  %v10766 = vadd.f32 0.0, %v10765
  %v10767 = vpop.f32.mrf.mxu0
  %10768 = vmatprep.mubr.bf16.mxu0 0
  %10769 = vmatmul.mubr.bf16.gmra.mxu0 %v10494
  %v10770 = vpop.f32.mrf.mxu0
  %v10771 = vadd.f32 0.0, %v10770
  %v10772 = vpop.f32.mrf.mxu0
  %v10773 = vpop.f32.mrf.mxu0
  %v10774 = vadd.f32 0.0, %v10773
  %v10775 = vpop.f32.mrf.mxu0
  %10776 = vmatprep.mubr.bf16.mxu0 0
  %10777 = vmatmul.mubr.bf16.gmra.mxu0 %v10497
  %v10778 = vpop.f32.mrf.mxu0
  %v10779 = vadd.f32 0.0, %v10778
  %v10780 = vpop.f32.mrf.mxu0
  %v10781 = vpop.f32.mrf.mxu0
  %v10782 = vadd.f32 0.0, %v10781
  %v10783 = vpop.f32.mrf.mxu0
  %10784 = vmatprep.mubr.bf16.mxu0 0
  %10785 = vmatmul.mubr.bf16.gmra.mxu0 %v10500
  %v10786 = vpop.f32.mrf.mxu0
  %v10787 = vadd.f32 0.0, %v10786
  %v10788 = vpop.f32.mrf.mxu0
  %v10789 = vpop.f32.mrf.mxu0
  %v10790 = vadd.f32 0.0, %v10789
  %v10791 = vpop.f32.mrf.mxu0
  %10792 = vmatprep.mubr.bf16.mxu0 0
  %10793 = vmatmul.mubr.bf16.gmra.mxu0 %v10503
  %v10794 = vpop.f32.mrf.mxu0
  %v10795 = vadd.f32 0.0, %v10794
  %v10796 = vpop.f32.mrf.mxu0
  %v10797 = vpop.f32.mrf.mxu0
  %v10798 = vadd.f32 0.0, %v10797
  %v10799 = vpop.f32.mrf.mxu0
  %10800 = vmatprep.mubr.bf16.mxu0 0
  %10801 = vmatmul.mubr.bf16.gmra.mxu0 %v10506
  %v10802 = vpop.f32.mrf.mxu0
  %v10803 = vadd.f32 0.0, %v10802
  %v10804 = vpop.f32.mrf.mxu0
  %v10805 = vpop.f32.mrf.mxu0
  %v10806 = vadd.f32 0.0, %v10805
  %v10807 = vpop.f32.mrf.mxu0
  %10808 = vmatprep.mubr.bf16.mxu0 0
  %10809 = vmatmul.mubr.bf16.gmra.mxu0 %v10509
  %v10810 = vpop.f32.mrf.mxu0
  %v10811 = vpop.f32.mrf.mxu0
  %v10812 = vpop.f32.mrf.mxu0
  %v10813 = vpop.f32.mrf.mxu0
  %10814 = vmatprep.mubr.bf16.mxu0 0
  %10815 = vmatmul.mubr.bf16.gmra.mxu0 %v10512
  %v10816 = vpop.f32.mrf.mxu0
  %v10817 = vpop.f32.mrf.mxu0
  %v10818 = vpop.f32.mrf.mxu0
  %v10819 = vpop.f32.mrf.mxu0
  %10820 = vmatprep.mubr.bf16.mxu0 0
  %10821 = vmatmul.mubr.bf16.gmra.mxu0 %v10515
  %v10822 = vpop.f32.mrf.mxu0
  %v10823 = vadd.f32 0.0, %v10822
  %v10824 = vpop.f32.mrf.mxu0
  %v10825 = vpop.f32.mrf.mxu0
  %v10826 = vadd.f32 0.0, %v10825
  %v10827 = vpop.f32.mrf.mxu0
  %10828 = vmatprep.mubr.bf16.mxu0 0
  %10829 = vmatmul.mubr.bf16.gmra.mxu0 %v10518
  %v10830 = vpop.f32.mrf.mxu0
  %v10831 = vadd.f32 0.0, %v10830
  %v10832 = vpop.f32.mrf.mxu0
  %v10833 = vpop.f32.mrf.mxu0
  %v10834 = vadd.f32 0.0, %v10833
  %v10835 = vpop.f32.mrf.mxu0
  %10836 = vmatprep.mubr.bf16.mxu0 0
  %10837 = vmatmul.mubr.bf16.gmra.mxu0 %v10521
  %v10838 = vpop.f32.mrf.mxu0
  %v10839 = vadd.f32 0.0, %v10838
  %v10840 = vpop.f32.mrf.mxu0
  %v10841 = vpop.f32.mrf.mxu0
  %v10842 = vadd.f32 0.0, %v10841
  %v10843 = vpop.f32.mrf.mxu0
  %10844 = vmatprep.mubr.bf16.mxu0 0
  %10845 = vmatmul.mubr.bf16.gmra.mxu0 %v10524
  %v10846 = vpop.f32.mrf.mxu0
  %v10847 = vadd.f32 0.0, %v10846
  %v10848 = vpop.f32.mrf.mxu0
  %v10849 = vpop.f32.mrf.mxu0
  %v10850 = vadd.f32 0.0, %v10849
  %v10851 = vpop.f32.mrf.mxu0
  %10852 = vmatprep.mubr.bf16.mxu0 0
  %10853 = vmatmul.mubr.bf16.gmra.mxu0 %v10527
  %v10854 = vpop.f32.mrf.mxu0
  %v10855 = vadd.f32 0.0, %v10854
  %v10856 = vpop.f32.mrf.mxu0
  %v10857 = vpop.f32.mrf.mxu0
  %v10858 = vadd.f32 0.0, %v10857
  %v10859 = vpop.f32.mrf.mxu0
  %10860 = vmatprep.mubr.bf16.mxu0 0
  %10861 = vmatmul.mubr.bf16.gmra.mxu0 %v10530
  %v10862 = vpop.f32.mrf.mxu0
  %v10863 = vadd.f32 0.0, %v10862
  %v10864 = vpop.f32.mrf.mxu0
  %v10865 = vpop.f32.mrf.mxu0
  %v10866 = vadd.f32 0.0, %v10865
  %v10867 = vpop.f32.mrf.mxu0
  %10868 = vmatprep.mubr.bf16.mxu0 0
  %10869 = vmatmul.mubr.bf16.gmra.mxu0 %v10533
  %v10870 = vpop.f32.mrf.mxu0
  %v10871 = vadd.f32 0.0, %v10870
  %v10872 = vpop.f32.mrf.mxu0
  %v10873 = vpop.f32.mrf.mxu0
  %v10874 = vadd.f32 0.0, %v10873
  %v10875 = vpop.f32.mrf.mxu0
  %10876 = vmatprep.mubr.bf16.mxu0 0
  %10877 = vmatmul.mubr.bf16.gmra.mxu0 %v10536
  %v10878 = vpop.f32.mrf.mxu0
  %v10879 = vpop.f32.mrf.mxu0
  %v10880 = vpop.f32.mrf.mxu0
  %v10881 = vpop.f32.mrf.mxu0
  %10882 = vmatprep.mubr.bf16.mxu0 0
  %10883 = vmatmul.mubr.bf16.gmra.mxu0 %v10539
  %v10884 = vpop.f32.mrf.mxu0
  %v10885 = vpop.f32.mrf.mxu0
  %v10886 = vpop.f32.mrf.mxu0
  %v10887 = vpop.f32.mrf.mxu0
  %10888 = vmatprep.mubr.bf16.mxu0 0
  %10889 = vmatmul.mubr.bf16.gmra.mxu0 %v10542
  %v10890 = vpop.f32.mrf.mxu0
  %v10891 = vadd.f32 0.0, %v10890
  %v10892 = vpop.f32.mrf.mxu0
  %v10893 = vpop.f32.mrf.mxu0
  %v10894 = vadd.f32 0.0, %v10893
  %v10895 = vpop.f32.mrf.mxu0
  %10896 = vmatprep.mubr.bf16.mxu0 0
  %10897 = vmatmul.mubr.bf16.gmra.mxu0 %v10545
  %v10898 = vpop.f32.mrf.mxu0
  %v10899 = vadd.f32 0.0, %v10898
  %v10900 = vpop.f32.mrf.mxu0
  %v10901 = vpop.f32.mrf.mxu0
  %v10902 = vadd.f32 0.0, %v10901
  %v10903 = vpop.f32.mrf.mxu0
  %10904 = vmatprep.mubr.bf16.mxu0 0
  %10905 = vmatmul.mubr.bf16.gmra.mxu0 %v10548
  %v10906 = vpop.f32.mrf.mxu0
  %v10907 = vadd.f32 0.0, %v10906
  %v10908 = vpop.f32.mrf.mxu0
  %v10909 = vpop.f32.mrf.mxu0
  %v10910 = vadd.f32 0.0, %v10909
  %v10911 = vpop.f32.mrf.mxu0
  %10912 = vmatprep.mubr.bf16.mxu0 0
  %10913 = vmatmul.mubr.bf16.gmra.mxu0 %v10551
  %v10914 = vpop.f32.mrf.mxu0
  %v10915 = vadd.f32 0.0, %v10914
  %v10916 = vpop.f32.mrf.mxu0
  %v10917 = vpop.f32.mrf.mxu0
  %v10918 = vadd.f32 0.0, %v10917
  %v10919 = vpop.f32.mrf.mxu0
  %10920 = vmatprep.mubr.bf16.mxu0 0
  %10921 = vmatmul.mubr.bf16.gmra.mxu0 %v10554
  %v10922 = vpop.f32.mrf.mxu0
  %v10923 = vadd.f32 0.0, %v10922
  %v10924 = vpop.f32.mrf.mxu0
  %v10925 = vpop.f32.mrf.mxu0
  %v10926 = vadd.f32 0.0, %v10925
  %v10927 = vpop.f32.mrf.mxu0
  %10928 = vmatprep.mubr.bf16.mxu0 0
  %10929 = vmatmul.mubr.bf16.gmra.mxu0 %v10557
  %v10930 = vpop.f32.mrf.mxu0
  %v10931 = vadd.f32 0.0, %v10930
  %v10932 = vpop.f32.mrf.mxu0
  %v10933 = vpop.f32.mrf.mxu0
  %v10934 = vadd.f32 0.0, %v10933
  %v10935 = vpop.f32.mrf.mxu0
  %10936 = vmatprep.mubr.bf16.mxu0 0
  %10937 = vmatmul.mubr.bf16.gmra.mxu0 %v10560
  %v10938 = vpop.f32.mrf.mxu0
  %v10939 = vadd.f32 0.0, %v10938
  %v10940 = vpop.f32.mrf.mxu0
  %v10941 = vpop.f32.mrf.mxu0
  %v10942 = vadd.f32 0.0, %v10941
  %v10943 = vpop.f32.mrf.mxu0
  %10944 = vmatprep.mubr.bf16.mxu0 0
  %10945 = vmatmul.mubr.bf16.gmra.mxu0 %v10563
  %v10946 = vpop.f32.mrf.mxu0
  %v10947 = vpop.f32.mrf.mxu0
  %v10948 = vpop.f32.mrf.mxu0
  %v10949 = vpop.f32.mrf.mxu0
  %10950 = vmatprep.mubr.bf16.mxu0 0
  %10951 = vmatmul.mubr.bf16.gmra.mxu0 %v10566
  %v10952 = vpop.f32.mrf.mxu0
  %v10953 = vpop.f32.mrf.mxu0
  %v10954 = vpop.f32.mrf.mxu0
  %v10955 = vpop.f32.mrf.mxu0
  %10956 = vmatprep.mubr.bf16.mxu0 0
  %10957 = vmatmul.mubr.bf16.gmra.mxu0 %v10569
  %v10958 = vpop.f32.mrf.mxu0
  %v10959 = vadd.f32 0.0, %v10958
  %v10960 = vpop.f32.mrf.mxu0
  %v10961 = vpop.f32.mrf.mxu0
  %v10962 = vadd.f32 0.0, %v10961
  %v10963 = vpop.f32.mrf.mxu0
  %10964 = vmatprep.mubr.bf16.mxu0 0
  %10965 = vmatmul.mubr.bf16.gmra.mxu0 %v10572
  %v10966 = vpop.f32.mrf.mxu0
  %v10967 = vadd.f32 0.0, %v10966
  %v10968 = vpop.f32.mrf.mxu0
  %v10969 = vpop.f32.mrf.mxu0
  %v10970 = vadd.f32 0.0, %v10969
  %v10971 = vpop.f32.mrf.mxu0
  %10972 = vmatprep.mubr.bf16.mxu0 0
  %10973 = vmatmul.mubr.bf16.gmra.mxu0 %v10575
  %v10974 = vpop.f32.mrf.mxu0
  %v10975 = vadd.f32 0.0, %v10974
  %v10976 = vpop.f32.mrf.mxu0
  %v10977 = vpop.f32.mrf.mxu0
  %v10978 = vadd.f32 0.0, %v10977
  %v10979 = vpop.f32.mrf.mxu0
  %10980 = vmatprep.mubr.bf16.mxu0 0
  %10981 = vmatmul.mubr.bf16.gmra.mxu0 %v10578
  %v10982 = vpop.f32.mrf.mxu0
  %v10983 = vadd.f32 0.0, %v10982
  %v10984 = vpop.f32.mrf.mxu0
  %v10985 = vpop.f32.mrf.mxu0
  %v10986 = vadd.f32 0.0, %v10985
  %v10987 = vpop.f32.mrf.mxu0
  %10988 = vmatprep.mubr.bf16.mxu0 0
  %10989 = vmatmul.mubr.bf16.gmra.mxu0 %v10581
  %v10990 = vpop.f32.mrf.mxu0
  %v10991 = vadd.f32 0.0, %v10990
  %v10992 = vpop.f32.mrf.mxu0
  %v10993 = vpop.f32.mrf.mxu0
  %v10994 = vadd.f32 0.0, %v10993
  %v10995 = vpop.f32.mrf.mxu0
  %10996 = vmatprep.mubr.bf16.mxu0 0
  %10997 = vmatmul.mubr.bf16.gmra.mxu0 %v10584
  %v10998 = vpop.f32.mrf.mxu0
  %v10999 = vadd.f32 0.0, %v10998
  %v11000 = vpop.f32.mrf.mxu0
  %v11001 = vpop.f32.mrf.mxu0
  %v11002 = vadd.f32 0.0, %v11001
  %v11003 = vpop.f32.mrf.mxu0
  %11004 = vmatprep.mubr.bf16.mxu0 0
  %11005 = vmatmul.mubr.bf16.gmra.mxu0 %v10587
  %v11006 = vpop.f32.mrf.mxu0
  %v11007 = vadd.f32 0.0, %v11006
  %v11008 = vpop.f32.mrf.mxu0
  %v11009 = vpop.f32.mrf.mxu0
  %v11010 = vadd.f32 0.0, %v11009
  %v11011 = vpop.f32.mrf.mxu0
  %11012 = vmatprep.mubr.bf16.mxu0 0
  %11013 = vmatmul.mubr.bf16.gmra.mxu0 %v10590
  %v11014 = vpop.f32.mrf.mxu0
  %v11015 = vpop.f32.mrf.mxu0
  %v11016 = vpop.f32.mrf.mxu0
  %v11017 = vpop.f32.mrf.mxu0
  %11018 = vmatprep.mubr.bf16.mxu0 0
  %11019 = vmatmul.mubr.bf16.gmra.mxu0 %v10593
  %v11020 = vpop.f32.mrf.mxu0
  %v11021 = vpop.f32.mrf.mxu0
  %v11022 = vpop.f32.mrf.mxu0
  %v11023 = vpop.f32.mrf.mxu0
  %11024 = vmatprep.mubr.bf16.mxu0 0
  %11025 = vmatmul.mubr.bf16.gmra.mxu0 %v10596
  %v11026 = vpop.f32.mrf.mxu0
  %v11027 = vadd.f32 0.0, %v11026
  %v11028 = vpop.f32.mrf.mxu0
  %v11029 = vpop.f32.mrf.mxu0
  %v11030 = vadd.f32 0.0, %v11029
  %v11031 = vpop.f32.mrf.mxu0
  %11032 = vmatprep.mubr.bf16.mxu0 0
  %11033 = vmatmul.mubr.bf16.gmra.mxu0 %v10599
  %v11034 = vpop.f32.mrf.mxu0
  %v11035 = vadd.f32 0.0, %v11034
  %v11036 = vpop.f32.mrf.mxu0
  %v11037 = vpop.f32.mrf.mxu0
  %v11038 = vadd.f32 0.0, %v11037
  %v11039 = vpop.f32.mrf.mxu0
  %11040 = vmatprep.mubr.bf16.mxu0 0
  %11041 = vmatmul.mubr.bf16.gmra.mxu0 %v10602
  %v11042 = vpop.f32.mrf.mxu0
  %v11043 = vadd.f32 0.0, %v11042
  %v11044 = vpop.f32.mrf.mxu0
  %v11045 = vpop.f32.mrf.mxu0
  %v11046 = vadd.f32 0.0, %v11045
  %v11047 = vpop.f32.mrf.mxu0
  %11048 = vmatprep.mubr.bf16.mxu0 0
  %11049 = vmatmul.mubr.bf16.gmra.mxu0 %v10605
  %v11050 = vpop.f32.mrf.mxu0
  %v11051 = vadd.f32 0.0, %v11050
  %v11052 = vpop.f32.mrf.mxu0
  %v11053 = vpop.f32.mrf.mxu0
  %v11054 = vadd.f32 0.0, %v11053
  %v11055 = vpop.f32.mrf.mxu0
  %11056 = vmatprep.mubr.bf16.mxu0 0
  %11057 = vmatmul.mubr.bf16.gmra.mxu0 %v10608
  %v11058 = vpop.f32.mrf.mxu0
  %v11059 = vadd.f32 0.0, %v11058
  %v11060 = vpop.f32.mrf.mxu0
  %v11061 = vpop.f32.mrf.mxu0
  %v11062 = vadd.f32 0.0, %v11061
  %v11063 = vpop.f32.mrf.mxu0
  %11064 = vmatprep.mubr.bf16.mxu0 0
  %11065 = vmatmul.mubr.bf16.gmra.mxu0 %v10611
  %v11066 = vpop.f32.mrf.mxu0
  %v11067 = vadd.f32 0.0, %v11066
  %v11068 = vpop.f32.mrf.mxu0
  %v11069 = vpop.f32.mrf.mxu0
  %v11070 = vadd.f32 0.0, %v11069
  %v11071 = vpop.f32.mrf.mxu0
  %11072 = vmatprep.mubr.bf16.mxu0 0
  %11073 = vmatmul.mubr.bf16.gmra.mxu0 %v10614
  %v11074 = vpop.f32.mrf.mxu0
  %v11075 = vadd.f32 0.0, %v11074
  %v11076 = vpop.f32.mrf.mxu0
  %v11077 = vpop.f32.mrf.mxu0
  %v11078 = vadd.f32 0.0, %v11077
  %v11079 = vpop.f32.mrf.mxu0
  %11080 = vmatprep.mubr.bf16.mxu0 0
  %11081 = vmatmul.mubr.bf16.gmra.mxu0 %v10617
  %v11082 = vpop.f32.mrf.mxu0
  %v11083 = vpop.f32.mrf.mxu0
  %v11084 = vpop.f32.mrf.mxu0
  %v11085 = vpop.f32.mrf.mxu0
  %11086 = vmatprep.mubr.bf16.mxu0 0
  %11087 = vmatmul.mubr.bf16.gmra.mxu0 %v10620
  %v11088 = vpop.f32.mrf.mxu0
  %v11089 = vpop.f32.mrf.mxu0
  %v11090 = vpop.f32.mrf.mxu0
  %v11091 = vpop.f32.mrf.mxu0
  %11092 = vmatprep.mubr.bf16.mxu0 0
  %11093 = vmatmul.mubr.bf16.gmra.mxu0 %v10623
  %v11094 = vpop.f32.mrf.mxu0
  %v11095 = vadd.f32 0.0, %v11094
  %v11096 = vpop.f32.mrf.mxu0
  %v11097 = vpop.f32.mrf.mxu0
  %v11098 = vadd.f32 0.0, %v11097
  %v11099 = vpop.f32.mrf.mxu0
  %11100 = vmatprep.mubr.bf16.mxu0 0
  %11101 = vmatmul.mubr.bf16.gmra.mxu0 %v10626
  %v11102 = vpop.f32.mrf.mxu0
  %v11103 = vadd.f32 0.0, %v11102
  %v11104 = vpop.f32.mrf.mxu0
  %v11105 = vpop.f32.mrf.mxu0
  %v11106 = vadd.f32 0.0, %v11105
  %v11107 = vpop.f32.mrf.mxu0
  %11108 = vmatprep.mubr.bf16.mxu0 0
  %11109 = vmatmul.mubr.bf16.gmra.mxu0 %v10629
  %v11110 = vpop.f32.mrf.mxu0
  %v11111 = vadd.f32 0.0, %v11110
  %v11112 = vpop.f32.mrf.mxu0
  %v11113 = vpop.f32.mrf.mxu0
  %v11114 = vadd.f32 0.0, %v11113
  %v11115 = vpop.f32.mrf.mxu0
  %11116 = vmatprep.mubr.bf16.mxu0 0
  %11117 = vmatmul.mubr.bf16.gmra.mxu0 %v10632
  %v11118 = vpop.f32.mrf.mxu0
  %v11119 = vadd.f32 0.0, %v11118
  %v11120 = vpop.f32.mrf.mxu0
  %v11121 = vpop.f32.mrf.mxu0
  %v11122 = vadd.f32 0.0, %v11121
  %v11123 = vpop.f32.mrf.mxu0
  %11124 = vmatprep.mubr.bf16.mxu0 0
  %11125 = vmatmul.mubr.bf16.gmra.mxu0 %v10635
  %v11126 = vpop.f32.mrf.mxu0
  %v11127 = vadd.f32 0.0, %v11126
  %v11128 = vpop.f32.mrf.mxu0
  %v11129 = vpop.f32.mrf.mxu0
  %v11130 = vadd.f32 0.0, %v11129
  %v11131 = vpop.f32.mrf.mxu0
  %11132 = vmatprep.mubr.bf16.mxu0 0
  %11133 = vmatmul.mubr.bf16.gmra.mxu0 %v10638
  %v11134 = vpop.f32.mrf.mxu0
  %v11135 = vadd.f32 0.0, %v11134
  %v11136 = vpop.f32.mrf.mxu0
  %v11137 = vpop.f32.mrf.mxu0
  %v11138 = vadd.f32 0.0, %v11137
  %v11139 = vpop.f32.mrf.mxu0
  %11140 = vmatprep.mubr.bf16.mxu0 0
  %11141 = vmatmul.mubr.bf16.gmra.mxu0 %v10641
  %v11142 = vpop.f32.mrf.mxu0
  %v11143 = vadd.f32 0.0, %v11142
  %v11144 = vpop.f32.mrf.mxu0
  %v11145 = vpop.f32.mrf.mxu0
  %v11146 = vadd.f32 0.0, %v11145
  %v11147 = vpop.f32.mrf.mxu0
  %11148 = vmatprep.mubr.bf16.mxu0 0
  %11149 = vmatmul.mubr.bf16.gmra.mxu0 %v10644
  %v11150 = vpop.f32.mrf.mxu0
  %v11151 = vpop.f32.mrf.mxu0
  %v11152 = vpop.f32.mrf.mxu0
  %v11153 = vpop.f32.mrf.mxu0
  %11154 = vmatprep.mubr.bf16.mxu0 0
  %11155 = vmatmul.mubr.bf16.gmra.mxu0 %v10647
  %v11156 = vpop.f32.mrf.mxu0
  %v11157 = vpop.f32.mrf.mxu0
  %v11158 = vpop.f32.mrf.mxu0
  %v11159 = vpop.f32.mrf.mxu0
  %11160 = vmatprep.mubr.bf16.mxu0 0
  %11161 = vmatmul.mubr.bf16.gmra.mxu0 %v10650
  %v11162 = vpop.f32.mrf.mxu0
  %v11163 = vpop.f32.mrf.mxu0
  %v11164 = vpop.f32.mrf.mxu0
  %v11165 = vpop.f32.mrf.mxu0
  %11166 = vdwg.mxu0
  %v11167 = vadd.f32 %v9896, %v10687
  %v11168 = vadd.f32 %v9897, %v10690
  %v11169 = vadd.f32 %v9898, %v10695
  %v11170 = vadd.f32 %v9899, %v10698
  %v11171 = vadd.f32 %v9900, %v10703
  %v11172 = vadd.f32 %v9901, %v10706
  %v11173 = vadd.f32 %v9902, %v10711
  %v11174 = vadd.f32 %v9903, %v10714
  %v11175 = vadd.f32 %v9904, %v10719
  %v11176 = vadd.f32 %v9905, %v10722
  %v11177 = vadd.f32 %v9906, %v10727
  %v11178 = vadd.f32 %v9907, %v10730
  %v11179 = vadd.f32 %v9908, %v10735
  %v11180 = vadd.f32 %v9909, %v10738
  %v11181 = vadd.f32 %v9910, %v10755
  %v11182 = vadd.f32 %v9911, %v10758
  %v11183 = vadd.f32 %v9912, %v10763
  %v11184 = vadd.f32 %v9913, %v10766
  %v11185 = vadd.f32 %v9914, %v10771
  %v11186 = vadd.f32 %v9915, %v10774
  %v11187 = vadd.f32 %v9916, %v10779
  %v11188 = vadd.f32 %v9917, %v10782
  %v11189 = vadd.f32 %v9918, %v10787
  %v11190 = vadd.f32 %v9919, %v10790
  %v11191 = vadd.f32 %v9920, %v10795
  %v11192 = vadd.f32 %v9921, %v10798
  %v11193 = vadd.f32 %v9922, %v10803
  %v11194 = vadd.f32 %v9923, %v10806
  %v11195 = vadd.f32 %v9924, %v10823
  %v11196 = vadd.f32 %v9925, %v10826
  %v11197 = vadd.f32 %v9926, %v10831
  %v11198 = vadd.f32 %v9927, %v10834
  %v11199 = vadd.f32 %v9928, %v10839
  %v11200 = vadd.f32 %v9929, %v10842
  %v11201 = vadd.f32 %v9930, %v10847
  %v11202 = vadd.f32 %v9931, %v10850
  %v11203 = vadd.f32 %v9932, %v10855
  %v11204 = vadd.f32 %v9933, %v10858
  %v11205 = vadd.f32 %v9934, %v10863
  %v11206 = vadd.f32 %v9935, %v10866
  %v11207 = vadd.f32 %v9936, %v10871
  %v11208 = vadd.f32 %v9937, %v10874
  %v11209 = vadd.f32 %v9938, %v10891
  %v11210 = vadd.f32 %v9939, %v10894
  %v11211 = vadd.f32 %v9940, %v10899
  %v11212 = vadd.f32 %v9941, %v10902
  %v11213 = vadd.f32 %v9942, %v10907
  %v11214 = vadd.f32 %v9943, %v10910
  %v11215 = vadd.f32 %v9944, %v10915
  %v11216 = vadd.f32 %v9945, %v10918
  %v11217 = vadd.f32 %v9946, %v10923
  %v11218 = vadd.f32 %v9947, %v10926
  %v11219 = vadd.f32 %v9948, %v10931
  %v11220 = vadd.f32 %v9949, %v10934
  %v11221 = vadd.f32 %v9950, %v10939
  %v11222 = vadd.f32 %v9951, %v10942
  %v11223 = vadd.f32 %v9952, %v10959
  %v11224 = vadd.f32 %v9953, %v10962
  %v11225 = vadd.f32 %v9954, %v10967
  %v11226 = vadd.f32 %v9955, %v10970
  %v11227 = vadd.f32 %v9956, %v10975
  %v11228 = vadd.f32 %v9957, %v10978
  %v11229 = vadd.f32 %v9958, %v10983
  %v11230 = vadd.f32 %v9959, %v10986
  %v11231 = vadd.f32 %v9960, %v10991
  %v11232 = vadd.f32 %v9961, %v10994
  %v11233 = vadd.f32 %v9962, %v10999
  %v11234 = vadd.f32 %v9963, %v11002
  %v11235 = vadd.f32 %v9964, %v11007
  %v11236 = vadd.f32 %v9965, %v11010
  %v11237 = vadd.f32 %v9966, %v11027
  %v11238 = vadd.f32 %v9967, %v11030
  %v11239 = vadd.f32 %v9968, %v11035
  %v11240 = vadd.f32 %v9969, %v11038
  %v11241 = vadd.f32 %v9970, %v11043
  %v11242 = vadd.f32 %v9971, %v11046
  %v11243 = vadd.f32 %v9972, %v11051
  %v11244 = vadd.f32 %v9973, %v11054
  %v11245 = vadd.f32 %v9974, %v11059
  %v11246 = vadd.f32 %v9975, %v11062
  %v11247 = vadd.f32 %v9976, %v11067
  %v11248 = vadd.f32 %v9977, %v11070
  %v11249 = vadd.f32 %v9978, %v11075
  %v11250 = vadd.f32 %v9979, %v11078
  %v11251 = vadd.f32 %v9980, %v11095
  %v11252 = vadd.f32 %v9981, %v11098
  %v11253 = vadd.f32 %v9982, %v11103
  %v11254 = vadd.f32 %v9983, %v11106
  %v11255 = vadd.f32 %v9984, %v11111
  %v11256 = vadd.f32 %v9985, %v11114
  %v11257 = vadd.f32 %v9986, %v11119
  %v11258 = vadd.f32 %v9987, %v11122
  %v11259 = vadd.f32 %v9988, %v11127
  %v11260 = vadd.f32 %v9989, %v11130
  %v11261 = vadd.f32 %v9990, %v11135
  %v11262 = vadd.f32 %v9991, %v11138
  %v11263 = vadd.f32 %v9992, %v11143
  %v11264 = vadd.f32 %v9993, %v11146
  %v11265 = vmax.f32 %v11167, 0.0
  %v11266 = vmax.f32 %v11168, 0.0
  %v11267 = vmax.f32 %v11169, 0.0
  %v11268 = vmax.f32 %v11170, 0.0
  %v11269 = vmax.f32 %v11171, 0.0
  %v11270 = vmax.f32 %v11172, 0.0
  %v11271 = vmax.f32 %v11173, 0.0
  %v11272 = vmax.f32 %v11174, 0.0
  %v11273 = vmax.f32 %v11175, 0.0
  %v11274 = vmax.f32 %v11176, 0.0
  %v11275 = vmax.f32 %v11177, 0.0
  %v11276 = vmax.f32 %v11178, 0.0
  %v11277 = vmax.f32 %v11179, 0.0
  %v11278 = vmax.f32 %v11180, 0.0
  %v11279 = vmax.f32 %v11181, 0.0
  %v11280 = vmax.f32 %v11182, 0.0
  %v11281 = vmax.f32 %v11183, 0.0
  %v11282 = vmax.f32 %v11184, 0.0
  %v11283 = vmax.f32 %v11185, 0.0
  %v11284 = vmax.f32 %v11186, 0.0
  %v11285 = vmax.f32 %v11187, 0.0
  %v11286 = vmax.f32 %v11188, 0.0
  %v11287 = vmax.f32 %v11189, 0.0
  %v11288 = vmax.f32 %v11190, 0.0
  %v11289 = vmax.f32 %v11191, 0.0
  %v11290 = vmax.f32 %v11192, 0.0
  %v11291 = vmax.f32 %v11193, 0.0
  %v11292 = vmax.f32 %v11194, 0.0
  %v11293 = vmax.f32 %v11195, 0.0
  %v11294 = vmax.f32 %v11196, 0.0
  %v11295 = vmax.f32 %v11197, 0.0
  %v11296 = vmax.f32 %v11198, 0.0
  %v11297 = vmax.f32 %v11199, 0.0
  %v11298 = vmax.f32 %v11200, 0.0
  %v11299 = vmax.f32 %v11201, 0.0
  %v11300 = vmax.f32 %v11202, 0.0
  %v11301 = vmax.f32 %v11203, 0.0
  %v11302 = vmax.f32 %v11204, 0.0
  %v11303 = vmax.f32 %v11205, 0.0
  %v11304 = vmax.f32 %v11206, 0.0
  %v11305 = vmax.f32 %v11207, 0.0
  %v11306 = vmax.f32 %v11208, 0.0
  %v11307 = vmax.f32 %v11209, 0.0
  %v11308 = vmax.f32 %v11210, 0.0
  %v11309 = vmax.f32 %v11211, 0.0
  %v11310 = vmax.f32 %v11212, 0.0
  %v11311 = vmax.f32 %v11213, 0.0
  %v11312 = vmax.f32 %v11214, 0.0
  %v11313 = vmax.f32 %v11215, 0.0
  %v11314 = vmax.f32 %v11216, 0.0
  %v11315 = vmax.f32 %v11217, 0.0
  %v11316 = vmax.f32 %v11218, 0.0
  %v11317 = vmax.f32 %v11219, 0.0
  %v11318 = vmax.f32 %v11220, 0.0
  %v11319 = vmax.f32 %v11221, 0.0
  %v11320 = vmax.f32 %v11222, 0.0
  %v11321 = vmax.f32 %v11223, 0.0
  %v11322 = vmax.f32 %v11224, 0.0
  %v11323 = vmax.f32 %v11225, 0.0
  %v11324 = vmax.f32 %v11226, 0.0
  %v11325 = vmax.f32 %v11227, 0.0
  %v11326 = vmax.f32 %v11228, 0.0
  %v11327 = vmax.f32 %v11229, 0.0
  %v11328 = vmax.f32 %v11230, 0.0
  %v11329 = vmax.f32 %v11231, 0.0
  %v11330 = vmax.f32 %v11232, 0.0
  %v11331 = vmax.f32 %v11233, 0.0
  %v11332 = vmax.f32 %v11234, 0.0
  %v11333 = vmax.f32 %v11235, 0.0
  %v11334 = vmax.f32 %v11236, 0.0
  %v11335 = vmax.f32 %v11237, 0.0
  %v11336 = vmax.f32 %v11238, 0.0
  %v11337 = vmax.f32 %v11239, 0.0
  %v11338 = vmax.f32 %v11240, 0.0
  %v11339 = vmax.f32 %v11241, 0.0
  %v11340 = vmax.f32 %v11242, 0.0
  %v11341 = vmax.f32 %v11243, 0.0
  %v11342 = vmax.f32 %v11244, 0.0
  %v11343 = vmax.f32 %v11245, 0.0
  %v11344 = vmax.f32 %v11246, 0.0
  %v11345 = vmax.f32 %v11247, 0.0
  %v11346 = vmax.f32 %v11248, 0.0
  %v11347 = vmax.f32 %v11249, 0.0
  %v11348 = vmax.f32 %v11250, 0.0
  %v11349 = vmax.f32 %v11251, 0.0
  %v11350 = vmax.f32 %v11252, 0.0
  %v11351 = vmax.f32 %v11253, 0.0
  %v11352 = vmax.f32 %v11254, 0.0
  %v11353 = vmax.f32 %v11255, 0.0
  %v11354 = vmax.f32 %v11256, 0.0
  %v11355 = vmax.f32 %v11257, 0.0
  %v11356 = vmax.f32 %v11258, 0.0
  %v11357 = vmax.f32 %v11259, 0.0
  %v11358 = vmax.f32 %v11260, 0.0
  %v11359 = vmax.f32 %v11261, 0.0
  %v11360 = vmax.f32 %v11262, 0.0
  %v11361 = vmax.f32 %v11263, 0.0
  %v11362 = vmax.f32 %v11264, 0.0
  %v11363 = vpack.c.bf16 %v11266, %v11265
  %v11364 = vpack.c.bf16 %v11268, %v11267
  %v11365 = vpack.c.bf16 %v11270, %v11269
  %v11366 = vpack.c.bf16 %v11272, %v11271
  %v11367 = vpack.c.bf16 %v11274, %v11273
  %v11368 = vpack.c.bf16 %v11276, %v11275
  %v11369 = vpack.c.bf16 %v11278, %v11277
  %v11370 = vpack.c.bf16 %v11280, %v11279
  %v11371 = vpack.c.bf16 %v11282, %v11281
  %v11372 = vpack.c.bf16 %v11284, %v11283
  %v11373 = vpack.c.bf16 %v11286, %v11285
  %v11374 = vpack.c.bf16 %v11288, %v11287
  %v11375 = vpack.c.bf16 %v11290, %v11289
  %v11376 = vpack.c.bf16 %v11292, %v11291
  %v11377 = vpack.c.bf16 %v11294, %v11293
  %v11378 = vpack.c.bf16 %v11296, %v11295
  %v11379 = vpack.c.bf16 %v11298, %v11297
  %v11380 = vpack.c.bf16 %v11300, %v11299
  %v11381 = vpack.c.bf16 %v11302, %v11301
  %v11382 = vpack.c.bf16 %v11304, %v11303
  %v11383 = vpack.c.bf16 %v11306, %v11305
  %v11384 = vpack.c.bf16 %v11308, %v11307
  %v11385 = vpack.c.bf16 %v11310, %v11309
  %v11386 = vpack.c.bf16 %v11312, %v11311
  %v11387 = vpack.c.bf16 %v11314, %v11313
  %v11388 = vpack.c.bf16 %v11316, %v11315
  %v11389 = vpack.c.bf16 %v11318, %v11317
  %v11390 = vpack.c.bf16 %v11320, %v11319
  %v11391 = vpack.c.bf16 %v11322, %v11321
  %v11392 = vpack.c.bf16 %v11324, %v11323
  %v11393 = vpack.c.bf16 %v11326, %v11325
  %v11394 = vpack.c.bf16 %v11328, %v11327
  %v11395 = vpack.c.bf16 %v11330, %v11329
  %v11396 = vpack.c.bf16 %v11332, %v11331
  %v11397 = vpack.c.bf16 %v11334, %v11333
  %v11398 = vpack.c.bf16 %v11336, %v11335
  %v11399 = vpack.c.bf16 %v11338, %v11337
  %v11400 = vpack.c.bf16 %v11340, %v11339
  %v11401 = vpack.c.bf16 %v11342, %v11341
  %v11402 = vpack.c.bf16 %v11344, %v11343
  %v11403 = vpack.c.bf16 %v11346, %v11345
  %v11404 = vpack.c.bf16 %v11348, %v11347
  %v11405 = vpack.c.bf16 %v11350, %v11349
  %v11406 = vpack.c.bf16 %v11352, %v11351
  %v11407 = vpack.c.bf16 %v11354, %v11353
  %v11408 = vpack.c.bf16 %v11356, %v11355
  %v11409 = vpack.c.bf16 %v11358, %v11357
  %v11410 = vpack.c.bf16 %v11360, %v11359
  %v11411 = vpack.c.bf16 %v11362, %v11361
  %v11412 = vld [vmem:[%s2] sm:$0xf]
  %v11413 = vld [vmem:[%s2 + $0x4] sm:$0xf]
  %s11414 = scalar_lea.vmem %s2, 8
  %v11415 = vld [vmem:[%s11414] sm:$0xf]
  %v11416 = vld [vmem:[%s11414 + $0x4] sm:$0xf]
  %v11419 = vunpack.c.l.b16 %v11415
  %v11420 = vunpack.c.l.b16 %v11416
  %v11421 = vpack.c.b16 %v11420, %v11419
  %vm11423 = vcmask 130048
  %v11425 = vsel %vm11423, %v11364, 0
  %11427 = vmatprep.subr.bf16.mxu0 0
  %11428 = vmatpush1.bf16.msra.mxu0 0
  %11429 = vmatprep.subr.bf16.mxu0 0
  %11430 = vmatpush1.bf16.msra.mxu0 0
  %11431 = vmatprep.subr.bf16.mxu0 0
  %11432 = vmatpush1.bf16.msra.mxu0 0
  %11433 = vmatprep.subr.bf16.mxu0 0
  %11434 = vmatpush1.bf16.msra.mxu0 0
  %11435 = vmatprep.subr.bf16.mxu0 0
  %11436 = vmatpush1.bf16.msra.mxu0 0
  %11437 = vmatprep.subr.bf16.mxu0 0
  %11438 = vmatpush1.bf16.msra.mxu0 0
  %11439 = vmatprep.subr.bf16.mxu0 0
  %11440 = vmatpush1.bf16.msra.mxu0 0
  %11441 = vmatprep.subr.bf16.mxu0 0
  %11442 = vmatpush1.bf16.msra.mxu0 %v11421
  %11443 = vmatprep.subr.bf16.mxu0 0
  %11444 = vmatpush2.bf16.msra.mxu0 0
  %11445 = vmatprep.subr.bf16.mxu0 0
  %11446 = vmatpush2.bf16.msra.mxu0 0
  %11447 = vmatprep.subr.bf16.mxu0 0
  %11448 = vmatpush2.bf16.msra.mxu0 0
  %11449 = vmatprep.subr.bf16.mxu0 0
  %11450 = vmatpush2.bf16.msra.mxu0 0
  %11451 = vmatprep.subr.bf16.mxu0 0
  %11452 = vmatpush2.bf16.msra.mxu0 0
  %11453 = vmatprep.subr.bf16.mxu0 0
  %11454 = vmatpush2.bf16.msra.mxu0 0
  %11455 = vmatprep.subr.bf16.mxu0 0
  %11456 = vmatpush2.bf16.msra.mxu0 0
  %11457 = vmatprep.subr.bf16.mxu0 0
  %11458 = vmatpush2.bf16.msra.mxu0 0
  %11459 = vmatprep.mubr.bf16.mxu0 0
  %11460 = vmatmul.mubr.bf16.gmra.mxu0 %v11425
  %v11461 = vpop.f32.mrf.mxu0
  %v11462 = vadd.f32 0.0, %v11461
  %v11463 = vpop.f32.mrf.mxu0
  %v11464 = vpop.f32.mrf.mxu0
  %v11465 = vadd.f32 0.0, %v11464
  %v11466 = vpop.f32.mrf.mxu0
  %11467 = vdwg.mxu0
  %v11470 = vunpack.c.l.b16 %v11412
  %v11471 = vunpack.c.l.b16 %v11413
  %v11472 = vpack.c.b16 %v11471, %v11470
  %v11475 = vsel %vm11423, %v11363, 0
  %11477 = vmatprep.subr.bf16.mxu0 0
  %11478 = vmatpush1.bf16.msra.mxu0 0
  %11479 = vmatprep.subr.bf16.mxu0 0
  %11480 = vmatpush1.bf16.msra.mxu0 0
  %11481 = vmatprep.subr.bf16.mxu0 0
  %11482 = vmatpush1.bf16.msra.mxu0 0
  %11483 = vmatprep.subr.bf16.mxu0 0
  %11484 = vmatpush1.bf16.msra.mxu0 0
  %11485 = vmatprep.subr.bf16.mxu0 0
  %11486 = vmatpush1.bf16.msra.mxu0 0
  %11487 = vmatprep.subr.bf16.mxu0 0
  %11488 = vmatpush1.bf16.msra.mxu0 0
  %11489 = vmatprep.subr.bf16.mxu0 0
  %11490 = vmatpush1.bf16.msra.mxu0 0
  %11491 = vmatprep.subr.bf16.mxu0 0
  %11492 = vmatpush1.bf16.msra.mxu0 %v11472
  %11493 = vmatprep.subr.bf16.mxu0 0
  %11494 = vmatpush2.bf16.msra.mxu0 0
  %11495 = vmatprep.subr.bf16.mxu0 0
  %11496 = vmatpush2.bf16.msra.mxu0 0
  %11497 = vmatprep.subr.bf16.mxu0 0
  %11498 = vmatpush2.bf16.msra.mxu0 0
  %11499 = vmatprep.subr.bf16.mxu0 0
  %11500 = vmatpush2.bf16.msra.mxu0 0
  %11501 = vmatprep.subr.bf16.mxu0 0
  %11502 = vmatpush2.bf16.msra.mxu0 0
  %11503 = vmatprep.subr.bf16.mxu0 0
  %11504 = vmatpush2.bf16.msra.mxu0 0
  %11505 = vmatprep.subr.bf16.mxu0 0
  %11506 = vmatpush2.bf16.msra.mxu0 0
  %11507 = vmatprep.subr.bf16.mxu0 0
  %11508 = vmatpush2.bf16.msra.mxu0 0
  %11509 = vmatprep.mubr.bf16.mxu0 0
  %11510 = vmatmul.mubr.bf16.gmra.mxu0 %v11475
  %v11511 = vpop.f32.mrf.mxu0
  %v11512 = vadd.f32 %v11462, %v11511
  %v11513 = vpop.f32.mrf.mxu0
  %v11514 = vpop.f32.mrf.mxu0
  %v11515 = vadd.f32 %v11465, %v11514
  %v11516 = vpop.f32.mrf.mxu0
  %11517 = vdwg.mxu0
  %s11518 = scalar_lea.vmem %s2, 16
  %v11519 = vld [vmem:[%s11518] sm:$0xf]
  %v11520 = vld [vmem:[%s11518 + $0x4] sm:$0xf]
  %v11523 = vunpack.c.l.b16 %v11519
  %v11524 = vunpack.c.l.b16 %v11520
  %v11525 = vpack.c.b16 %v11524, %v11523
  %v11528 = vsel %vm11423, %v11365, 0
  %11530 = vmatprep.subr.bf16.mxu0 0
  %11531 = vmatpush1.bf16.msra.mxu0 0
  %11532 = vmatprep.subr.bf16.mxu0 0
  %11533 = vmatpush1.bf16.msra.mxu0 0
  %11534 = vmatprep.subr.bf16.mxu0 0
  %11535 = vmatpush1.bf16.msra.mxu0 0
  %11536 = vmatprep.subr.bf16.mxu0 0
  %11537 = vmatpush1.bf16.msra.mxu0 0
  %11538 = vmatprep.subr.bf16.mxu0 0
  %11539 = vmatpush1.bf16.msra.mxu0 0
  %11540 = vmatprep.subr.bf16.mxu0 0
  %11541 = vmatpush1.bf16.msra.mxu0 0
  %11542 = vmatprep.subr.bf16.mxu0 0
  %11543 = vmatpush1.bf16.msra.mxu0 0
  %11544 = vmatprep.subr.bf16.mxu0 0
  %11545 = vmatpush1.bf16.msra.mxu0 %v11525
  %11546 = vmatprep.subr.bf16.mxu0 0
  %11547 = vmatpush2.bf16.msra.mxu0 0
  %11548 = vmatprep.subr.bf16.mxu0 0
  %11549 = vmatpush2.bf16.msra.mxu0 0
  %11550 = vmatprep.subr.bf16.mxu0 0
  %11551 = vmatpush2.bf16.msra.mxu0 0
  %11552 = vmatprep.subr.bf16.mxu0 0
  %11553 = vmatpush2.bf16.msra.mxu0 0
  %11554 = vmatprep.subr.bf16.mxu0 0
  %11555 = vmatpush2.bf16.msra.mxu0 0
  %11556 = vmatprep.subr.bf16.mxu0 0
  %11557 = vmatpush2.bf16.msra.mxu0 0
  %11558 = vmatprep.subr.bf16.mxu0 0
  %11559 = vmatpush2.bf16.msra.mxu0 0
  %11560 = vmatprep.subr.bf16.mxu0 0
  %11561 = vmatpush2.bf16.msra.mxu0 0
  %11562 = vmatprep.mubr.bf16.mxu0 0
  %11563 = vmatmul.mubr.bf16.gmra.mxu0 %v11528
  %v11564 = vpop.f32.mrf.mxu0
  %v11565 = vadd.f32 0.0, %v11564
  %v11566 = vpop.f32.mrf.mxu0
  %v11567 = vpop.f32.mrf.mxu0
  %v11568 = vadd.f32 0.0, %v11567
  %v11569 = vpop.f32.mrf.mxu0
  %11570 = vdwg.mxu0
  %v11571 = vadd.f32 %v11512, %v11565
  %v11572 = vadd.f32 %v11515, %v11568
  %s11573 = scalar_lea.vmem %s2, 24
  %v11574 = vld [vmem:[%s11573] sm:$0xf]
  %v11575 = vld [vmem:[%s11573 + $0x4] sm:$0xf]
  %v11578 = vunpack.c.l.b16 %v11574
  %v11579 = vunpack.c.l.b16 %v11575
  %v11580 = vpack.c.b16 %v11579, %v11578
  %v11583 = vsel %vm11423, %v11366, 0
  %11585 = vmatprep.subr.bf16.mxu0 0
  %11586 = vmatpush1.bf16.msra.mxu0 0
  %11587 = vmatprep.subr.bf16.mxu0 0
  %11588 = vmatpush1.bf16.msra.mxu0 0
  %11589 = vmatprep.subr.bf16.mxu0 0
  %11590 = vmatpush1.bf16.msra.mxu0 0
  %11591 = vmatprep.subr.bf16.mxu0 0
  %11592 = vmatpush1.bf16.msra.mxu0 0
  %11593 = vmatprep.subr.bf16.mxu0 0
  %11594 = vmatpush1.bf16.msra.mxu0 0
  %11595 = vmatprep.subr.bf16.mxu0 0
  %11596 = vmatpush1.bf16.msra.mxu0 0
  %11597 = vmatprep.subr.bf16.mxu0 0
  %11598 = vmatpush1.bf16.msra.mxu0 0
  %11599 = vmatprep.subr.bf16.mxu0 0
  %11600 = vmatpush1.bf16.msra.mxu0 %v11580
  %11601 = vmatprep.subr.bf16.mxu0 0
  %11602 = vmatpush2.bf16.msra.mxu0 0
  %11603 = vmatprep.subr.bf16.mxu0 0
  %11604 = vmatpush2.bf16.msra.mxu0 0
  %11605 = vmatprep.subr.bf16.mxu0 0
  %11606 = vmatpush2.bf16.msra.mxu0 0
  %11607 = vmatprep.subr.bf16.mxu0 0
  %11608 = vmatpush2.bf16.msra.mxu0 0
  %11609 = vmatprep.subr.bf16.mxu0 0
  %11610 = vmatpush2.bf16.msra.mxu0 0
  %11611 = vmatprep.subr.bf16.mxu0 0
  %11612 = vmatpush2.bf16.msra.mxu0 0
  %11613 = vmatprep.subr.bf16.mxu0 0
  %11614 = vmatpush2.bf16.msra.mxu0 0
  %11615 = vmatprep.subr.bf16.mxu0 0
  %11616 = vmatpush2.bf16.msra.mxu0 0
  %11617 = vmatprep.mubr.bf16.mxu0 0
  %11618 = vmatmul.mubr.bf16.gmra.mxu0 %v11583
  %v11619 = vpop.f32.mrf.mxu0
  %v11620 = vadd.f32 0.0, %v11619
  %v11621 = vpop.f32.mrf.mxu0
  %v11622 = vpop.f32.mrf.mxu0
  %v11623 = vadd.f32 0.0, %v11622
  %v11624 = vpop.f32.mrf.mxu0
  %11625 = vdwg.mxu0
  %v11626 = vadd.f32 %v11571, %v11620
  %v11627 = vadd.f32 %v11572, %v11623
  %s11628 = scalar_lea.vmem %s2, 32
  %v11629 = vld [vmem:[%s11628] sm:$0xf]
  %v11630 = vld [vmem:[%s11628 + $0x4] sm:$0xf]
  %v11633 = vunpack.c.l.b16 %v11629
  %v11634 = vunpack.c.l.b16 %v11630
  %v11635 = vpack.c.b16 %v11634, %v11633
  %v11638 = vsel %vm11423, %v11367, 0
  %11640 = vmatprep.subr.bf16.mxu0 0
  %11641 = vmatpush1.bf16.msra.mxu0 0
  %11642 = vmatprep.subr.bf16.mxu0 0
  %11643 = vmatpush1.bf16.msra.mxu0 0
  %11644 = vmatprep.subr.bf16.mxu0 0
  %11645 = vmatpush1.bf16.msra.mxu0 0
  %11646 = vmatprep.subr.bf16.mxu0 0
  %11647 = vmatpush1.bf16.msra.mxu0 0
  %11648 = vmatprep.subr.bf16.mxu0 0
  %11649 = vmatpush1.bf16.msra.mxu0 0
  %11650 = vmatprep.subr.bf16.mxu0 0
  %11651 = vmatpush1.bf16.msra.mxu0 0
  %11652 = vmatprep.subr.bf16.mxu0 0
  %11653 = vmatpush1.bf16.msra.mxu0 0
  %11654 = vmatprep.subr.bf16.mxu0 0
  %11655 = vmatpush1.bf16.msra.mxu0 %v11635
  %11656 = vmatprep.subr.bf16.mxu0 0
  %11657 = vmatpush2.bf16.msra.mxu0 0
  %11658 = vmatprep.subr.bf16.mxu0 0
  %11659 = vmatpush2.bf16.msra.mxu0 0
  %11660 = vmatprep.subr.bf16.mxu0 0
  %11661 = vmatpush2.bf16.msra.mxu0 0
  %11662 = vmatprep.subr.bf16.mxu0 0
  %11663 = vmatpush2.bf16.msra.mxu0 0
  %11664 = vmatprep.subr.bf16.mxu0 0
  %11665 = vmatpush2.bf16.msra.mxu0 0
  %11666 = vmatprep.subr.bf16.mxu0 0
  %11667 = vmatpush2.bf16.msra.mxu0 0
  %11668 = vmatprep.subr.bf16.mxu0 0
  %11669 = vmatpush2.bf16.msra.mxu0 0
  %11670 = vmatprep.subr.bf16.mxu0 0
  %11671 = vmatpush2.bf16.msra.mxu0 0
  %11672 = vmatprep.mubr.bf16.mxu0 0
  %11673 = vmatmul.mubr.bf16.gmra.mxu0 %v11638
  %v11674 = vpop.f32.mrf.mxu0
  %v11675 = vadd.f32 0.0, %v11674
  %v11676 = vpop.f32.mrf.mxu0
  %v11677 = vpop.f32.mrf.mxu0
  %v11678 = vadd.f32 0.0, %v11677
  %v11679 = vpop.f32.mrf.mxu0
  %11680 = vdwg.mxu0
  %v11681 = vadd.f32 %v11626, %v11675
  %v11682 = vadd.f32 %v11627, %v11678
  %s11683 = scalar_lea.vmem %s2, 40
  %v11684 = vld [vmem:[%s11683] sm:$0xf]
  %v11685 = vld [vmem:[%s11683 + $0x4] sm:$0xf]
  %v11688 = vunpack.c.l.b16 %v11684
  %v11689 = vunpack.c.l.b16 %v11685
  %v11690 = vpack.c.b16 %v11689, %v11688
  %v11693 = vsel %vm11423, %v11368, 0
  %11695 = vmatprep.subr.bf16.mxu0 0
  %11696 = vmatpush1.bf16.msra.mxu0 0
  %11697 = vmatprep.subr.bf16.mxu0 0
  %11698 = vmatpush1.bf16.msra.mxu0 0
  %11699 = vmatprep.subr.bf16.mxu0 0
  %11700 = vmatpush1.bf16.msra.mxu0 0
  %11701 = vmatprep.subr.bf16.mxu0 0
  %11702 = vmatpush1.bf16.msra.mxu0 0
  %11703 = vmatprep.subr.bf16.mxu0 0
  %11704 = vmatpush1.bf16.msra.mxu0 0
  %11705 = vmatprep.subr.bf16.mxu0 0
  %11706 = vmatpush1.bf16.msra.mxu0 0
  %11707 = vmatprep.subr.bf16.mxu0 0
  %11708 = vmatpush1.bf16.msra.mxu0 0
  %11709 = vmatprep.subr.bf16.mxu0 0
  %11710 = vmatpush1.bf16.msra.mxu0 %v11690
  %11711 = vmatprep.subr.bf16.mxu0 0
  %11712 = vmatpush2.bf16.msra.mxu0 0
  %11713 = vmatprep.subr.bf16.mxu0 0
  %11714 = vmatpush2.bf16.msra.mxu0 0
  %11715 = vmatprep.subr.bf16.mxu0 0
  %11716 = vmatpush2.bf16.msra.mxu0 0
  %11717 = vmatprep.subr.bf16.mxu0 0
  %11718 = vmatpush2.bf16.msra.mxu0 0
  %11719 = vmatprep.subr.bf16.mxu0 0
  %11720 = vmatpush2.bf16.msra.mxu0 0
  %11721 = vmatprep.subr.bf16.mxu0 0
  %11722 = vmatpush2.bf16.msra.mxu0 0
  %11723 = vmatprep.subr.bf16.mxu0 0
  %11724 = vmatpush2.bf16.msra.mxu0 0
  %11725 = vmatprep.subr.bf16.mxu0 0
  %11726 = vmatpush2.bf16.msra.mxu0 0
  %11727 = vmatprep.mubr.bf16.mxu0 0
  %11728 = vmatmul.mubr.bf16.gmra.mxu0 %v11693
  %v11729 = vpop.f32.mrf.mxu0
  %v11730 = vadd.f32 0.0, %v11729
  %v11731 = vpop.f32.mrf.mxu0
  %v11732 = vpop.f32.mrf.mxu0
  %v11733 = vadd.f32 0.0, %v11732
  %v11734 = vpop.f32.mrf.mxu0
  %11735 = vdwg.mxu0
  %v11736 = vadd.f32 %v11681, %v11730
  %v11737 = vadd.f32 %v11682, %v11733
  %s11738 = scalar_lea.vmem %s2, 48
  %v11739 = vld [vmem:[%s11738] sm:$0xf]
  %v11740 = vld [vmem:[%s11738 + $0x4] sm:$0xf]
  %v11743 = vunpack.c.l.b16 %v11739
  %v11744 = vunpack.c.l.b16 %v11740
  %v11745 = vpack.c.b16 %v11744, %v11743
  %v11748 = vsel %vm11423, %v11369, 0
  %11750 = vmatprep.subr.bf16.mxu0 0
  %11751 = vmatpush1.bf16.msra.mxu0 0
  %11752 = vmatprep.subr.bf16.mxu0 0
  %11753 = vmatpush1.bf16.msra.mxu0 0
  %11754 = vmatprep.subr.bf16.mxu0 0
  %11755 = vmatpush1.bf16.msra.mxu0 0
  %11756 = vmatprep.subr.bf16.mxu0 0
  %11757 = vmatpush1.bf16.msra.mxu0 0
  %11758 = vmatprep.subr.bf16.mxu0 0
  %11759 = vmatpush1.bf16.msra.mxu0 0
  %11760 = vmatprep.subr.bf16.mxu0 0
  %11761 = vmatpush1.bf16.msra.mxu0 0
  %11762 = vmatprep.subr.bf16.mxu0 0
  %11763 = vmatpush1.bf16.msra.mxu0 0
  %11764 = vmatprep.subr.bf16.mxu0 0
  %11765 = vmatpush1.bf16.msra.mxu0 %v11745
  %11766 = vmatprep.subr.bf16.mxu0 0
  %11767 = vmatpush2.bf16.msra.mxu0 0
  %11768 = vmatprep.subr.bf16.mxu0 0
  %11769 = vmatpush2.bf16.msra.mxu0 0
  %11770 = vmatprep.subr.bf16.mxu0 0
  %11771 = vmatpush2.bf16.msra.mxu0 0
  %11772 = vmatprep.subr.bf16.mxu0 0
  %11773 = vmatpush2.bf16.msra.mxu0 0
  %11774 = vmatprep.subr.bf16.mxu0 0
  %11775 = vmatpush2.bf16.msra.mxu0 0
  %11776 = vmatprep.subr.bf16.mxu0 0
  %11777 = vmatpush2.bf16.msra.mxu0 0
  %11778 = vmatprep.subr.bf16.mxu0 0
  %11779 = vmatpush2.bf16.msra.mxu0 0
  %11780 = vmatprep.subr.bf16.mxu0 0
  %11781 = vmatpush2.bf16.msra.mxu0 0
  %11782 = vmatprep.mubr.bf16.mxu0 0
  %11783 = vmatmul.mubr.bf16.gmra.mxu0 %v11748
  %v11784 = vpop.f32.mrf.mxu0
  %v11785 = vadd.f32 0.0, %v11784
  %v11786 = vpop.f32.mrf.mxu0
  %v11787 = vpop.f32.mrf.mxu0
  %v11788 = vadd.f32 0.0, %v11787
  %v11789 = vpop.f32.mrf.mxu0
  %11790 = vdwg.mxu0
  %v11791 = vadd.f32 %v11736, %v11785
  %v11792 = vadd.f32 %v11737, %v11788
  %s11793 = scalar_lea.vmem %s2, 56
  %v11794 = vld [vmem:[%s11793] sm:$0xf]
  %v11795 = vld [vmem:[%s11793 + $0x4] sm:$0xf]
  %v11798 = vunpack.c.l.b16 %v11794
  %v11799 = vunpack.c.l.b16 %v11795
  %v11800 = vpack.c.b16 %v11799, %v11798
  %v11803 = vsel %vm11423, %v11370, 0
  %11805 = vmatprep.subr.bf16.mxu0 0
  %11806 = vmatpush1.bf16.msra.mxu0 0
  %11807 = vmatprep.subr.bf16.mxu0 0
  %11808 = vmatpush1.bf16.msra.mxu0 0
  %11809 = vmatprep.subr.bf16.mxu0 0
  %11810 = vmatpush1.bf16.msra.mxu0 0
  %11811 = vmatprep.subr.bf16.mxu0 0
  %11812 = vmatpush1.bf16.msra.mxu0 0
  %11813 = vmatprep.subr.bf16.mxu0 0
  %11814 = vmatpush1.bf16.msra.mxu0 0
  %11815 = vmatprep.subr.bf16.mxu0 0
  %11816 = vmatpush1.bf16.msra.mxu0 0
  %11817 = vmatprep.subr.bf16.mxu0 0
  %11818 = vmatpush1.bf16.msra.mxu0 0
  %11819 = vmatprep.subr.bf16.mxu0 0
  %11820 = vmatpush1.bf16.msra.mxu0 %v11800
  %11821 = vmatprep.subr.bf16.mxu0 0
  %11822 = vmatpush2.bf16.msra.mxu0 0
  %11823 = vmatprep.subr.bf16.mxu0 0
  %11824 = vmatpush2.bf16.msra.mxu0 0
  %11825 = vmatprep.subr.bf16.mxu0 0
  %11826 = vmatpush2.bf16.msra.mxu0 0
  %11827 = vmatprep.subr.bf16.mxu0 0
  %11828 = vmatpush2.bf16.msra.mxu0 0
  %11829 = vmatprep.subr.bf16.mxu0 0
  %11830 = vmatpush2.bf16.msra.mxu0 0
  %11831 = vmatprep.subr.bf16.mxu0 0
  %11832 = vmatpush2.bf16.msra.mxu0 0
  %11833 = vmatprep.subr.bf16.mxu0 0
  %11834 = vmatpush2.bf16.msra.mxu0 0
  %11835 = vmatprep.subr.bf16.mxu0 0
  %11836 = vmatpush2.bf16.msra.mxu0 0
  %11837 = vmatprep.mubr.bf16.mxu0 0
  %11838 = vmatmul.mubr.bf16.gmra.mxu0 %v11803
  %v11839 = vpop.f32.mrf.mxu0
  %v11840 = vadd.f32 0.0, %v11839
  %v11841 = vpop.f32.mrf.mxu0
  %v11842 = vpop.f32.mrf.mxu0
  %v11843 = vadd.f32 0.0, %v11842
  %v11844 = vpop.f32.mrf.mxu0
  %11845 = vdwg.mxu0
  %v11846 = vadd.f32 %v11791, %v11840
  %v11847 = vadd.f32 %v11792, %v11843
  %s11848 = scalar_lea.vmem %s2, 64
  %v11849 = vld [vmem:[%s11848] sm:$0xf]
  %v11850 = vld [vmem:[%s11848 + $0x4] sm:$0xf]
  %v11853 = vunpack.c.l.b16 %v11849
  %v11854 = vunpack.c.l.b16 %v11850
  %v11855 = vpack.c.b16 %v11854, %v11853
  %v11858 = vsel %vm11423, %v11371, 0
  %11860 = vmatprep.subr.bf16.mxu0 0
  %11861 = vmatpush1.bf16.msra.mxu0 0
  %11862 = vmatprep.subr.bf16.mxu0 0
  %11863 = vmatpush1.bf16.msra.mxu0 0
  %11864 = vmatprep.subr.bf16.mxu0 0
  %11865 = vmatpush1.bf16.msra.mxu0 0
  %11866 = vmatprep.subr.bf16.mxu0 0
  %11867 = vmatpush1.bf16.msra.mxu0 0
  %11868 = vmatprep.subr.bf16.mxu0 0
  %11869 = vmatpush1.bf16.msra.mxu0 0
  %11870 = vmatprep.subr.bf16.mxu0 0
  %11871 = vmatpush1.bf16.msra.mxu0 0
  %11872 = vmatprep.subr.bf16.mxu0 0
  %11873 = vmatpush1.bf16.msra.mxu0 0
  %11874 = vmatprep.subr.bf16.mxu0 0
  %11875 = vmatpush1.bf16.msra.mxu0 %v11855
  %11876 = vmatprep.subr.bf16.mxu0 0
  %11877 = vmatpush2.bf16.msra.mxu0 0
  %11878 = vmatprep.subr.bf16.mxu0 0
  %11879 = vmatpush2.bf16.msra.mxu0 0
  %11880 = vmatprep.subr.bf16.mxu0 0
  %11881 = vmatpush2.bf16.msra.mxu0 0
  %11882 = vmatprep.subr.bf16.mxu0 0
  %11883 = vmatpush2.bf16.msra.mxu0 0
  %11884 = vmatprep.subr.bf16.mxu0 0
  %11885 = vmatpush2.bf16.msra.mxu0 0
  %11886 = vmatprep.subr.bf16.mxu0 0
  %11887 = vmatpush2.bf16.msra.mxu0 0
  %11888 = vmatprep.subr.bf16.mxu0 0
  %11889 = vmatpush2.bf16.msra.mxu0 0
  %11890 = vmatprep.subr.bf16.mxu0 0
  %11891 = vmatpush2.bf16.msra.mxu0 0
  %11892 = vmatprep.mubr.bf16.mxu0 0
  %11893 = vmatmul.mubr.bf16.gmra.mxu0 %v11858
  %v11894 = vpop.f32.mrf.mxu0
  %v11895 = vadd.f32 0.0, %v11894
  %v11896 = vpop.f32.mrf.mxu0
  %v11897 = vpop.f32.mrf.mxu0
  %v11898 = vadd.f32 0.0, %v11897
  %v11899 = vpop.f32.mrf.mxu0
  %11900 = vdwg.mxu0
  %v11901 = vadd.f32 %v11846, %v11895
  %v11902 = vadd.f32 %v11847, %v11898
  %s11903 = scalar_lea.vmem %s2, 72
  %v11904 = vld [vmem:[%s11903] sm:$0xf]
  %v11905 = vld [vmem:[%s11903 + $0x4] sm:$0xf]
  %v11908 = vunpack.c.l.b16 %v11904
  %v11909 = vunpack.c.l.b16 %v11905
  %v11910 = vpack.c.b16 %v11909, %v11908
  %v11913 = vsel %vm11423, %v11372, 0
  %11915 = vmatprep.subr.bf16.mxu0 0
  %11916 = vmatpush1.bf16.msra.mxu0 0
  %11917 = vmatprep.subr.bf16.mxu0 0
  %11918 = vmatpush1.bf16.msra.mxu0 0
  %11919 = vmatprep.subr.bf16.mxu0 0
  %11920 = vmatpush1.bf16.msra.mxu0 0
  %11921 = vmatprep.subr.bf16.mxu0 0
  %11922 = vmatpush1.bf16.msra.mxu0 0
  %11923 = vmatprep.subr.bf16.mxu0 0
  %11924 = vmatpush1.bf16.msra.mxu0 0
  %11925 = vmatprep.subr.bf16.mxu0 0
  %11926 = vmatpush1.bf16.msra.mxu0 0
  %11927 = vmatprep.subr.bf16.mxu0 0
  %11928 = vmatpush1.bf16.msra.mxu0 0
  %11929 = vmatprep.subr.bf16.mxu0 0
  %11930 = vmatpush1.bf16.msra.mxu0 %v11910
  %11931 = vmatprep.subr.bf16.mxu0 0
  %11932 = vmatpush2.bf16.msra.mxu0 0
  %11933 = vmatprep.subr.bf16.mxu0 0
  %11934 = vmatpush2.bf16.msra.mxu0 0
  %11935 = vmatprep.subr.bf16.mxu0 0
  %11936 = vmatpush2.bf16.msra.mxu0 0
  %11937 = vmatprep.subr.bf16.mxu0 0
  %11938 = vmatpush2.bf16.msra.mxu0 0
  %11939 = vmatprep.subr.bf16.mxu0 0
  %11940 = vmatpush2.bf16.msra.mxu0 0
  %11941 = vmatprep.subr.bf16.mxu0 0
  %11942 = vmatpush2.bf16.msra.mxu0 0
  %11943 = vmatprep.subr.bf16.mxu0 0
  %11944 = vmatpush2.bf16.msra.mxu0 0
  %11945 = vmatprep.subr.bf16.mxu0 0
  %11946 = vmatpush2.bf16.msra.mxu0 0
  %11947 = vmatprep.mubr.bf16.mxu0 0
  %11948 = vmatmul.mubr.bf16.gmra.mxu0 %v11913
  %v11949 = vpop.f32.mrf.mxu0
  %v11950 = vadd.f32 0.0, %v11949
  %v11951 = vpop.f32.mrf.mxu0
  %v11952 = vpop.f32.mrf.mxu0
  %v11953 = vadd.f32 0.0, %v11952
  %v11954 = vpop.f32.mrf.mxu0
  %11955 = vdwg.mxu0
  %v11956 = vadd.f32 %v11901, %v11950
  %v11957 = vadd.f32 %v11902, %v11953
  %s11958 = scalar_lea.vmem %s2, 80
  %v11959 = vld [vmem:[%s11958] sm:$0xf]
  %v11960 = vld [vmem:[%s11958 + $0x4] sm:$0xf]
  %v11963 = vunpack.c.l.b16 %v11959
  %v11964 = vunpack.c.l.b16 %v11960
  %v11965 = vpack.c.b16 %v11964, %v11963
  %v11968 = vsel %vm11423, %v11373, 0
  %11970 = vmatprep.subr.bf16.mxu0 0
  %11971 = vmatpush1.bf16.msra.mxu0 0
  %11972 = vmatprep.subr.bf16.mxu0 0
  %11973 = vmatpush1.bf16.msra.mxu0 0
  %11974 = vmatprep.subr.bf16.mxu0 0
  %11975 = vmatpush1.bf16.msra.mxu0 0
  %11976 = vmatprep.subr.bf16.mxu0 0
  %11977 = vmatpush1.bf16.msra.mxu0 0
  %11978 = vmatprep.subr.bf16.mxu0 0
  %11979 = vmatpush1.bf16.msra.mxu0 0
  %11980 = vmatprep.subr.bf16.mxu0 0
  %11981 = vmatpush1.bf16.msra.mxu0 0
  %11982 = vmatprep.subr.bf16.mxu0 0
  %11983 = vmatpush1.bf16.msra.mxu0 0
  %11984 = vmatprep.subr.bf16.mxu0 0
  %11985 = vmatpush1.bf16.msra.mxu0 %v11965
  %11986 = vmatprep.subr.bf16.mxu0 0
  %11987 = vmatpush2.bf16.msra.mxu0 0
  %11988 = vmatprep.subr.bf16.mxu0 0
  %11989 = vmatpush2.bf16.msra.mxu0 0
  %11990 = vmatprep.subr.bf16.mxu0 0
  %11991 = vmatpush2.bf16.msra.mxu0 0
  %11992 = vmatprep.subr.bf16.mxu0 0
  %11993 = vmatpush2.bf16.msra.mxu0 0
  %11994 = vmatprep.subr.bf16.mxu0 0
  %11995 = vmatpush2.bf16.msra.mxu0 0
  %11996 = vmatprep.subr.bf16.mxu0 0
  %11997 = vmatpush2.bf16.msra.mxu0 0
  %11998 = vmatprep.subr.bf16.mxu0 0
  %11999 = vmatpush2.bf16.msra.mxu0 0
  %12000 = vmatprep.subr.bf16.mxu0 0
  %12001 = vmatpush2.bf16.msra.mxu0 0
  %12002 = vmatprep.mubr.bf16.mxu0 0
  %12003 = vmatmul.mubr.bf16.gmra.mxu0 %v11968
  %v12004 = vpop.f32.mrf.mxu0
  %v12005 = vadd.f32 0.0, %v12004
  %v12006 = vpop.f32.mrf.mxu0
  %v12007 = vpop.f32.mrf.mxu0
  %v12008 = vadd.f32 0.0, %v12007
  %v12009 = vpop.f32.mrf.mxu0
  %12010 = vdwg.mxu0
  %v12011 = vadd.f32 %v11956, %v12005
  %v12012 = vadd.f32 %v11957, %v12008
  %s12013 = scalar_lea.vmem %s2, 88
  %v12014 = vld [vmem:[%s12013] sm:$0xf]
  %v12015 = vld [vmem:[%s12013 + $0x4] sm:$0xf]
  %v12018 = vunpack.c.l.b16 %v12014
  %v12019 = vunpack.c.l.b16 %v12015
  %v12020 = vpack.c.b16 %v12019, %v12018
  %v12023 = vsel %vm11423, %v11374, 0
  %12025 = vmatprep.subr.bf16.mxu0 0
  %12026 = vmatpush1.bf16.msra.mxu0 0
  %12027 = vmatprep.subr.bf16.mxu0 0
  %12028 = vmatpush1.bf16.msra.mxu0 0
  %12029 = vmatprep.subr.bf16.mxu0 0
  %12030 = vmatpush1.bf16.msra.mxu0 0
  %12031 = vmatprep.subr.bf16.mxu0 0
  %12032 = vmatpush1.bf16.msra.mxu0 0
  %12033 = vmatprep.subr.bf16.mxu0 0
  %12034 = vmatpush1.bf16.msra.mxu0 0
  %12035 = vmatprep.subr.bf16.mxu0 0
  %12036 = vmatpush1.bf16.msra.mxu0 0
  %12037 = vmatprep.subr.bf16.mxu0 0
  %12038 = vmatpush1.bf16.msra.mxu0 0
  %12039 = vmatprep.subr.bf16.mxu0 0
  %12040 = vmatpush1.bf16.msra.mxu0 %v12020
  %12041 = vmatprep.subr.bf16.mxu0 0
  %12042 = vmatpush2.bf16.msra.mxu0 0
  %12043 = vmatprep.subr.bf16.mxu0 0
  %12044 = vmatpush2.bf16.msra.mxu0 0
  %12045 = vmatprep.subr.bf16.mxu0 0
  %12046 = vmatpush2.bf16.msra.mxu0 0
  %12047 = vmatprep.subr.bf16.mxu0 0
  %12048 = vmatpush2.bf16.msra.mxu0 0
  %12049 = vmatprep.subr.bf16.mxu0 0
  %12050 = vmatpush2.bf16.msra.mxu0 0
  %12051 = vmatprep.subr.bf16.mxu0 0
  %12052 = vmatpush2.bf16.msra.mxu0 0
  %12053 = vmatprep.subr.bf16.mxu0 0
  %12054 = vmatpush2.bf16.msra.mxu0 0
  %12055 = vmatprep.subr.bf16.mxu0 0
  %12056 = vmatpush2.bf16.msra.mxu0 0
  %12057 = vmatprep.mubr.bf16.mxu0 0
  %12058 = vmatmul.mubr.bf16.gmra.mxu0 %v12023
  %v12059 = vpop.f32.mrf.mxu0
  %v12060 = vadd.f32 0.0, %v12059
  %v12061 = vpop.f32.mrf.mxu0
  %v12062 = vpop.f32.mrf.mxu0
  %v12063 = vadd.f32 0.0, %v12062
  %v12064 = vpop.f32.mrf.mxu0
  %12065 = vdwg.mxu0
  %v12066 = vadd.f32 %v12011, %v12060
  %v12067 = vadd.f32 %v12012, %v12063
  %s12068 = scalar_lea.vmem %s2, 96
  %v12069 = vld [vmem:[%s12068] sm:$0xf]
  %v12070 = vld [vmem:[%s12068 + $0x4] sm:$0xf]
  %v12073 = vunpack.c.l.b16 %v12069
  %v12074 = vunpack.c.l.b16 %v12070
  %v12075 = vpack.c.b16 %v12074, %v12073
  %v12078 = vsel %vm11423, %v11375, 0
  %12080 = vmatprep.subr.bf16.mxu0 0
  %12081 = vmatpush1.bf16.msra.mxu0 0
  %12082 = vmatprep.subr.bf16.mxu0 0
  %12083 = vmatpush1.bf16.msra.mxu0 0
  %12084 = vmatprep.subr.bf16.mxu0 0
  %12085 = vmatpush1.bf16.msra.mxu0 0
  %12086 = vmatprep.subr.bf16.mxu0 0
  %12087 = vmatpush1.bf16.msra.mxu0 0
  %12088 = vmatprep.subr.bf16.mxu0 0
  %12089 = vmatpush1.bf16.msra.mxu0 0
  %12090 = vmatprep.subr.bf16.mxu0 0
  %12091 = vmatpush1.bf16.msra.mxu0 0
  %12092 = vmatprep.subr.bf16.mxu0 0
  %12093 = vmatpush1.bf16.msra.mxu0 0
  %12094 = vmatprep.subr.bf16.mxu0 0
  %12095 = vmatpush1.bf16.msra.mxu0 %v12075
  %12096 = vmatprep.subr.bf16.mxu0 0
  %12097 = vmatpush2.bf16.msra.mxu0 0
  %12098 = vmatprep.subr.bf16.mxu0 0
  %12099 = vmatpush2.bf16.msra.mxu0 0
  %12100 = vmatprep.subr.bf16.mxu0 0
  %12101 = vmatpush2.bf16.msra.mxu0 0
  %12102 = vmatprep.subr.bf16.mxu0 0
  %12103 = vmatpush2.bf16.msra.mxu0 0
  %12104 = vmatprep.subr.bf16.mxu0 0
  %12105 = vmatpush2.bf16.msra.mxu0 0
  %12106 = vmatprep.subr.bf16.mxu0 0
  %12107 = vmatpush2.bf16.msra.mxu0 0
  %12108 = vmatprep.subr.bf16.mxu0 0
  %12109 = vmatpush2.bf16.msra.mxu0 0
  %12110 = vmatprep.subr.bf16.mxu0 0
  %12111 = vmatpush2.bf16.msra.mxu0 0
  %12112 = vmatprep.mubr.bf16.mxu0 0
  %12113 = vmatmul.mubr.bf16.gmra.mxu0 %v12078
  %v12114 = vpop.f32.mrf.mxu0
  %v12115 = vadd.f32 0.0, %v12114
  %v12116 = vpop.f32.mrf.mxu0
  %v12117 = vpop.f32.mrf.mxu0
  %v12118 = vadd.f32 0.0, %v12117
  %v12119 = vpop.f32.mrf.mxu0
  %12120 = vdwg.mxu0
  %v12121 = vadd.f32 %v12066, %v12115
  %v12122 = vadd.f32 %v12067, %v12118
  %s12123 = scalar_lea.vmem %s2, 104
  %v12124 = vld [vmem:[%s12123] sm:$0xf]
  %v12125 = vld [vmem:[%s12123 + $0x4] sm:$0xf]
  %v12128 = vunpack.c.l.b16 %v12124
  %v12129 = vunpack.c.l.b16 %v12125
  %v12130 = vpack.c.b16 %v12129, %v12128
  %v12133 = vsel %vm11423, %v11376, 0
  %12135 = vmatprep.subr.bf16.mxu0 0
  %12136 = vmatpush1.bf16.msra.mxu0 0
  %12137 = vmatprep.subr.bf16.mxu0 0
  %12138 = vmatpush1.bf16.msra.mxu0 0
  %12139 = vmatprep.subr.bf16.mxu0 0
  %12140 = vmatpush1.bf16.msra.mxu0 0
  %12141 = vmatprep.subr.bf16.mxu0 0
  %12142 = vmatpush1.bf16.msra.mxu0 0
  %12143 = vmatprep.subr.bf16.mxu0 0
  %12144 = vmatpush1.bf16.msra.mxu0 0
  %12145 = vmatprep.subr.bf16.mxu0 0
  %12146 = vmatpush1.bf16.msra.mxu0 0
  %12147 = vmatprep.subr.bf16.mxu0 0
  %12148 = vmatpush1.bf16.msra.mxu0 0
  %12149 = vmatprep.subr.bf16.mxu0 0
  %12150 = vmatpush1.bf16.msra.mxu0 %v12130
  %12151 = vmatprep.subr.bf16.mxu0 0
  %12152 = vmatpush2.bf16.msra.mxu0 0
  %12153 = vmatprep.subr.bf16.mxu0 0
  %12154 = vmatpush2.bf16.msra.mxu0 0
  %12155 = vmatprep.subr.bf16.mxu0 0
  %12156 = vmatpush2.bf16.msra.mxu0 0
  %12157 = vmatprep.subr.bf16.mxu0 0
  %12158 = vmatpush2.bf16.msra.mxu0 0
  %12159 = vmatprep.subr.bf16.mxu0 0
  %12160 = vmatpush2.bf16.msra.mxu0 0
  %12161 = vmatprep.subr.bf16.mxu0 0
  %12162 = vmatpush2.bf16.msra.mxu0 0
  %12163 = vmatprep.subr.bf16.mxu0 0
  %12164 = vmatpush2.bf16.msra.mxu0 0
  %12165 = vmatprep.subr.bf16.mxu0 0
  %12166 = vmatpush2.bf16.msra.mxu0 0
  %12167 = vmatprep.mubr.bf16.mxu0 0
  %12168 = vmatmul.mubr.bf16.gmra.mxu0 %v12133
  %v12169 = vpop.f32.mrf.mxu0
  %v12170 = vadd.f32 0.0, %v12169
  %v12171 = vpop.f32.mrf.mxu0
  %v12172 = vpop.f32.mrf.mxu0
  %v12173 = vadd.f32 0.0, %v12172
  %v12174 = vpop.f32.mrf.mxu0
  %12175 = vdwg.mxu0
  %v12176 = vadd.f32 %v12121, %v12170
  %v12177 = vadd.f32 %v12122, %v12173
  %s12178 = scalar_lea.vmem %s2, 112
  %v12179 = vld [vmem:[%s12178] sm:$0xf]
  %v12180 = vld [vmem:[%s12178 + $0x4] sm:$0xf]
  %v12183 = vunpack.c.l.b16 %v12179
  %v12184 = vunpack.c.l.b16 %v12180
  %v12185 = vpack.c.b16 %v12184, %v12183
  %v12188 = vsel %vm11423, %v11377, 0
  %12190 = vmatprep.subr.bf16.mxu0 0
  %12191 = vmatpush1.bf16.msra.mxu0 0
  %12192 = vmatprep.subr.bf16.mxu0 0
  %12193 = vmatpush1.bf16.msra.mxu0 0
  %12194 = vmatprep.subr.bf16.mxu0 0
  %12195 = vmatpush1.bf16.msra.mxu0 0
  %12196 = vmatprep.subr.bf16.mxu0 0
  %12197 = vmatpush1.bf16.msra.mxu0 0
  %12198 = vmatprep.subr.bf16.mxu0 0
  %12199 = vmatpush1.bf16.msra.mxu0 0
  %12200 = vmatprep.subr.bf16.mxu0 0
  %12201 = vmatpush1.bf16.msra.mxu0 0
  %12202 = vmatprep.subr.bf16.mxu0 0
  %12203 = vmatpush1.bf16.msra.mxu0 0
  %12204 = vmatprep.subr.bf16.mxu0 0
  %12205 = vmatpush1.bf16.msra.mxu0 %v12185
  %12206 = vmatprep.subr.bf16.mxu0 0
  %12207 = vmatpush2.bf16.msra.mxu0 0
  %12208 = vmatprep.subr.bf16.mxu0 0
  %12209 = vmatpush2.bf16.msra.mxu0 0
  %12210 = vmatprep.subr.bf16.mxu0 0
  %12211 = vmatpush2.bf16.msra.mxu0 0
  %12212 = vmatprep.subr.bf16.mxu0 0
  %12213 = vmatpush2.bf16.msra.mxu0 0
  %12214 = vmatprep.subr.bf16.mxu0 0
  %12215 = vmatpush2.bf16.msra.mxu0 0
  %12216 = vmatprep.subr.bf16.mxu0 0
  %12217 = vmatpush2.bf16.msra.mxu0 0
  %12218 = vmatprep.subr.bf16.mxu0 0
  %12219 = vmatpush2.bf16.msra.mxu0 0
  %12220 = vmatprep.subr.bf16.mxu0 0
  %12221 = vmatpush2.bf16.msra.mxu0 0
  %12222 = vmatprep.mubr.bf16.mxu0 0
  %12223 = vmatmul.mubr.bf16.gmra.mxu0 %v12188
  %v12224 = vpop.f32.mrf.mxu0
  %v12225 = vadd.f32 0.0, %v12224
  %v12226 = vpop.f32.mrf.mxu0
  %v12227 = vpop.f32.mrf.mxu0
  %v12228 = vadd.f32 0.0, %v12227
  %v12229 = vpop.f32.mrf.mxu0
  %12230 = vdwg.mxu0
  %v12231 = vadd.f32 %v12176, %v12225
  %v12232 = vadd.f32 %v12177, %v12228
  %s12233 = scalar_lea.vmem %s2, 120
  %v12234 = vld [vmem:[%s12233] sm:$0xf]
  %v12235 = vld [vmem:[%s12233 + $0x4] sm:$0xf]
  %v12238 = vunpack.c.l.b16 %v12234
  %v12239 = vunpack.c.l.b16 %v12235
  %v12240 = vpack.c.b16 %v12239, %v12238
  %v12243 = vsel %vm11423, %v11378, 0
  %12245 = vmatprep.subr.bf16.mxu0 0
  %12246 = vmatpush1.bf16.msra.mxu0 0
  %12247 = vmatprep.subr.bf16.mxu0 0
  %12248 = vmatpush1.bf16.msra.mxu0 0
  %12249 = vmatprep.subr.bf16.mxu0 0
  %12250 = vmatpush1.bf16.msra.mxu0 0
  %12251 = vmatprep.subr.bf16.mxu0 0
  %12252 = vmatpush1.bf16.msra.mxu0 0
  %12253 = vmatprep.subr.bf16.mxu0 0
  %12254 = vmatpush1.bf16.msra.mxu0 0
  %12255 = vmatprep.subr.bf16.mxu0 0
  %12256 = vmatpush1.bf16.msra.mxu0 0
  %12257 = vmatprep.subr.bf16.mxu0 0
  %12258 = vmatpush1.bf16.msra.mxu0 0
  %12259 = vmatprep.subr.bf16.mxu0 0
  %12260 = vmatpush1.bf16.msra.mxu0 %v12240
  %12261 = vmatprep.subr.bf16.mxu0 0
  %12262 = vmatpush2.bf16.msra.mxu0 0
  %12263 = vmatprep.subr.bf16.mxu0 0
  %12264 = vmatpush2.bf16.msra.mxu0 0
  %12265 = vmatprep.subr.bf16.mxu0 0
  %12266 = vmatpush2.bf16.msra.mxu0 0
  %12267 = vmatprep.subr.bf16.mxu0 0
  %12268 = vmatpush2.bf16.msra.mxu0 0
  %12269 = vmatprep.subr.bf16.mxu0 0
  %12270 = vmatpush2.bf16.msra.mxu0 0
  %12271 = vmatprep.subr.bf16.mxu0 0
  %12272 = vmatpush2.bf16.msra.mxu0 0
  %12273 = vmatprep.subr.bf16.mxu0 0
  %12274 = vmatpush2.bf16.msra.mxu0 0
  %12275 = vmatprep.subr.bf16.mxu0 0
  %12276 = vmatpush2.bf16.msra.mxu0 0
  %12277 = vmatprep.mubr.bf16.mxu0 0
  %12278 = vmatmul.mubr.bf16.gmra.mxu0 %v12243
  %v12279 = vpop.f32.mrf.mxu0
  %v12280 = vadd.f32 0.0, %v12279
  %v12281 = vpop.f32.mrf.mxu0
  %v12282 = vpop.f32.mrf.mxu0
  %v12283 = vadd.f32 0.0, %v12282
  %v12284 = vpop.f32.mrf.mxu0
  %12285 = vdwg.mxu0
  %v12286 = vadd.f32 %v12231, %v12280
  %v12287 = vadd.f32 %v12232, %v12283
  %s12288 = scalar_lea.vmem %s2, 128
  %v12289 = vld [vmem:[%s12288] sm:$0xf]
  %v12290 = vld [vmem:[%s12288 + $0x4] sm:$0xf]
  %v12293 = vunpack.c.l.b16 %v12289
  %v12294 = vunpack.c.l.b16 %v12290
  %v12295 = vpack.c.b16 %v12294, %v12293
  %v12298 = vsel %vm11423, %v11379, 0
  %12300 = vmatprep.subr.bf16.mxu0 0
  %12301 = vmatpush1.bf16.msra.mxu0 0
  %12302 = vmatprep.subr.bf16.mxu0 0
  %12303 = vmatpush1.bf16.msra.mxu0 0
  %12304 = vmatprep.subr.bf16.mxu0 0
  %12305 = vmatpush1.bf16.msra.mxu0 0
  %12306 = vmatprep.subr.bf16.mxu0 0
  %12307 = vmatpush1.bf16.msra.mxu0 0
  %12308 = vmatprep.subr.bf16.mxu0 0
  %12309 = vmatpush1.bf16.msra.mxu0 0
  %12310 = vmatprep.subr.bf16.mxu0 0
  %12311 = vmatpush1.bf16.msra.mxu0 0
  %12312 = vmatprep.subr.bf16.mxu0 0
  %12313 = vmatpush1.bf16.msra.mxu0 0
  %12314 = vmatprep.subr.bf16.mxu0 0
  %12315 = vmatpush1.bf16.msra.mxu0 %v12295
  %12316 = vmatprep.subr.bf16.mxu0 0
  %12317 = vmatpush2.bf16.msra.mxu0 0
  %12318 = vmatprep.subr.bf16.mxu0 0
  %12319 = vmatpush2.bf16.msra.mxu0 0
  %12320 = vmatprep.subr.bf16.mxu0 0
  %12321 = vmatpush2.bf16.msra.mxu0 0
  %12322 = vmatprep.subr.bf16.mxu0 0
  %12323 = vmatpush2.bf16.msra.mxu0 0
  %12324 = vmatprep.subr.bf16.mxu0 0
  %12325 = vmatpush2.bf16.msra.mxu0 0
  %12326 = vmatprep.subr.bf16.mxu0 0
  %12327 = vmatpush2.bf16.msra.mxu0 0
  %12328 = vmatprep.subr.bf16.mxu0 0
  %12329 = vmatpush2.bf16.msra.mxu0 0
  %12330 = vmatprep.subr.bf16.mxu0 0
  %12331 = vmatpush2.bf16.msra.mxu0 0
  %12332 = vmatprep.mubr.bf16.mxu0 0
  %12333 = vmatmul.mubr.bf16.gmra.mxu0 %v12298
  %v12334 = vpop.f32.mrf.mxu0
  %v12335 = vadd.f32 0.0, %v12334
  %v12336 = vpop.f32.mrf.mxu0
  %v12337 = vpop.f32.mrf.mxu0
  %v12338 = vadd.f32 0.0, %v12337
  %v12339 = vpop.f32.mrf.mxu0
  %12340 = vdwg.mxu0
  %v12341 = vadd.f32 %v12286, %v12335
  %v12342 = vadd.f32 %v12287, %v12338
  %s12343 = scalar_lea.vmem %s2, 136
  %v12344 = vld [vmem:[%s12343] sm:$0xf]
  %v12345 = vld [vmem:[%s12343 + $0x4] sm:$0xf]
  %v12348 = vunpack.c.l.b16 %v12344
  %v12349 = vunpack.c.l.b16 %v12345
  %v12350 = vpack.c.b16 %v12349, %v12348
  %v12353 = vsel %vm11423, %v11380, 0
  %12355 = vmatprep.subr.bf16.mxu0 0
  %12356 = vmatpush1.bf16.msra.mxu0 0
  %12357 = vmatprep.subr.bf16.mxu0 0
  %12358 = vmatpush1.bf16.msra.mxu0 0
  %12359 = vmatprep.subr.bf16.mxu0 0
  %12360 = vmatpush1.bf16.msra.mxu0 0
  %12361 = vmatprep.subr.bf16.mxu0 0
  %12362 = vmatpush1.bf16.msra.mxu0 0
  %12363 = vmatprep.subr.bf16.mxu0 0
  %12364 = vmatpush1.bf16.msra.mxu0 0
  %12365 = vmatprep.subr.bf16.mxu0 0
  %12366 = vmatpush1.bf16.msra.mxu0 0
  %12367 = vmatprep.subr.bf16.mxu0 0
  %12368 = vmatpush1.bf16.msra.mxu0 0
  %12369 = vmatprep.subr.bf16.mxu0 0
  %12370 = vmatpush1.bf16.msra.mxu0 %v12350
  %12371 = vmatprep.subr.bf16.mxu0 0
  %12372 = vmatpush2.bf16.msra.mxu0 0
  %12373 = vmatprep.subr.bf16.mxu0 0
  %12374 = vmatpush2.bf16.msra.mxu0 0
  %12375 = vmatprep.subr.bf16.mxu0 0
  %12376 = vmatpush2.bf16.msra.mxu0 0
  %12377 = vmatprep.subr.bf16.mxu0 0
  %12378 = vmatpush2.bf16.msra.mxu0 0
  %12379 = vmatprep.subr.bf16.mxu0 0
  %12380 = vmatpush2.bf16.msra.mxu0 0
  %12381 = vmatprep.subr.bf16.mxu0 0
  %12382 = vmatpush2.bf16.msra.mxu0 0
  %12383 = vmatprep.subr.bf16.mxu0 0
  %12384 = vmatpush2.bf16.msra.mxu0 0
  %12385 = vmatprep.subr.bf16.mxu0 0
  %12386 = vmatpush2.bf16.msra.mxu0 0
  %12387 = vmatprep.mubr.bf16.mxu0 0
  %12388 = vmatmul.mubr.bf16.gmra.mxu0 %v12353
  %v12389 = vpop.f32.mrf.mxu0
  %v12390 = vadd.f32 0.0, %v12389
  %v12391 = vpop.f32.mrf.mxu0
  %v12392 = vpop.f32.mrf.mxu0
  %v12393 = vadd.f32 0.0, %v12392
  %v12394 = vpop.f32.mrf.mxu0
  %12395 = vdwg.mxu0
  %v12396 = vadd.f32 %v12341, %v12390
  %v12397 = vadd.f32 %v12342, %v12393
  %s12398 = scalar_lea.vmem %s2, 144
  %v12399 = vld [vmem:[%s12398] sm:$0xf]
  %v12400 = vld [vmem:[%s12398 + $0x4] sm:$0xf]
  %v12403 = vunpack.c.l.b16 %v12399
  %v12404 = vunpack.c.l.b16 %v12400
  %v12405 = vpack.c.b16 %v12404, %v12403
  %v12408 = vsel %vm11423, %v11381, 0
  %12410 = vmatprep.subr.bf16.mxu0 0
  %12411 = vmatpush1.bf16.msra.mxu0 0
  %12412 = vmatprep.subr.bf16.mxu0 0
  %12413 = vmatpush1.bf16.msra.mxu0 0
  %12414 = vmatprep.subr.bf16.mxu0 0
  %12415 = vmatpush1.bf16.msra.mxu0 0
  %12416 = vmatprep.subr.bf16.mxu0 0
  %12417 = vmatpush1.bf16.msra.mxu0 0
  %12418 = vmatprep.subr.bf16.mxu0 0
  %12419 = vmatpush1.bf16.msra.mxu0 0
  %12420 = vmatprep.subr.bf16.mxu0 0
  %12421 = vmatpush1.bf16.msra.mxu0 0
  %12422 = vmatprep.subr.bf16.mxu0 0
  %12423 = vmatpush1.bf16.msra.mxu0 0
  %12424 = vmatprep.subr.bf16.mxu0 0
  %12425 = vmatpush1.bf16.msra.mxu0 %v12405
  %12426 = vmatprep.subr.bf16.mxu0 0
  %12427 = vmatpush2.bf16.msra.mxu0 0
  %12428 = vmatprep.subr.bf16.mxu0 0
  %12429 = vmatpush2.bf16.msra.mxu0 0
  %12430 = vmatprep.subr.bf16.mxu0 0
  %12431 = vmatpush2.bf16.msra.mxu0 0
  %12432 = vmatprep.subr.bf16.mxu0 0
  %12433 = vmatpush2.bf16.msra.mxu0 0
  %12434 = vmatprep.subr.bf16.mxu0 0
  %12435 = vmatpush2.bf16.msra.mxu0 0
  %12436 = vmatprep.subr.bf16.mxu0 0
  %12437 = vmatpush2.bf16.msra.mxu0 0
  %12438 = vmatprep.subr.bf16.mxu0 0
  %12439 = vmatpush2.bf16.msra.mxu0 0
  %12440 = vmatprep.subr.bf16.mxu0 0
  %12441 = vmatpush2.bf16.msra.mxu0 0
  %12442 = vmatprep.mubr.bf16.mxu0 0
  %12443 = vmatmul.mubr.bf16.gmra.mxu0 %v12408
  %v12444 = vpop.f32.mrf.mxu0
  %v12445 = vadd.f32 0.0, %v12444
  %v12446 = vpop.f32.mrf.mxu0
  %v12447 = vpop.f32.mrf.mxu0
  %v12448 = vadd.f32 0.0, %v12447
  %v12449 = vpop.f32.mrf.mxu0
  %12450 = vdwg.mxu0
  %v12451 = vadd.f32 %v12396, %v12445
  %v12452 = vadd.f32 %v12397, %v12448
  %s12453 = scalar_lea.vmem %s2, 152
  %v12454 = vld [vmem:[%s12453] sm:$0xf]
  %v12455 = vld [vmem:[%s12453 + $0x4] sm:$0xf]
  %v12458 = vunpack.c.l.b16 %v12454
  %v12459 = vunpack.c.l.b16 %v12455
  %v12460 = vpack.c.b16 %v12459, %v12458
  %v12463 = vsel %vm11423, %v11382, 0
  %12465 = vmatprep.subr.bf16.mxu0 0
  %12466 = vmatpush1.bf16.msra.mxu0 0
  %12467 = vmatprep.subr.bf16.mxu0 0
  %12468 = vmatpush1.bf16.msra.mxu0 0
  %12469 = vmatprep.subr.bf16.mxu0 0
  %12470 = vmatpush1.bf16.msra.mxu0 0
  %12471 = vmatprep.subr.bf16.mxu0 0
  %12472 = vmatpush1.bf16.msra.mxu0 0
  %12473 = vmatprep.subr.bf16.mxu0 0
  %12474 = vmatpush1.bf16.msra.mxu0 0
  %12475 = vmatprep.subr.bf16.mxu0 0
  %12476 = vmatpush1.bf16.msra.mxu0 0
  %12477 = vmatprep.subr.bf16.mxu0 0
  %12478 = vmatpush1.bf16.msra.mxu0 0
  %12479 = vmatprep.subr.bf16.mxu0 0
  %12480 = vmatpush1.bf16.msra.mxu0 %v12460
  %12481 = vmatprep.subr.bf16.mxu0 0
  %12482 = vmatpush2.bf16.msra.mxu0 0
  %12483 = vmatprep.subr.bf16.mxu0 0
  %12484 = vmatpush2.bf16.msra.mxu0 0
  %12485 = vmatprep.subr.bf16.mxu0 0
  %12486 = vmatpush2.bf16.msra.mxu0 0
  %12487 = vmatprep.subr.bf16.mxu0 0
  %12488 = vmatpush2.bf16.msra.mxu0 0
  %12489 = vmatprep.subr.bf16.mxu0 0
  %12490 = vmatpush2.bf16.msra.mxu0 0
  %12491 = vmatprep.subr.bf16.mxu0 0
  %12492 = vmatpush2.bf16.msra.mxu0 0
  %12493 = vmatprep.subr.bf16.mxu0 0
  %12494 = vmatpush2.bf16.msra.mxu0 0
  %12495 = vmatprep.subr.bf16.mxu0 0
  %12496 = vmatpush2.bf16.msra.mxu0 0
  %12497 = vmatprep.mubr.bf16.mxu0 0
  %12498 = vmatmul.mubr.bf16.gmra.mxu0 %v12463
  %v12499 = vpop.f32.mrf.mxu0
  %v12500 = vadd.f32 0.0, %v12499
  %v12501 = vpop.f32.mrf.mxu0
  %v12502 = vpop.f32.mrf.mxu0
  %v12503 = vadd.f32 0.0, %v12502
  %v12504 = vpop.f32.mrf.mxu0
  %12505 = vdwg.mxu0
  %v12506 = vadd.f32 %v12451, %v12500
  %v12507 = vadd.f32 %v12452, %v12503
  %s12508 = scalar_lea.vmem %s2, 160
  %v12509 = vld [vmem:[%s12508] sm:$0xf]
  %v12510 = vld [vmem:[%s12508 + $0x4] sm:$0xf]
  %v12513 = vunpack.c.l.b16 %v12509
  %v12514 = vunpack.c.l.b16 %v12510
  %v12515 = vpack.c.b16 %v12514, %v12513
  %v12518 = vsel %vm11423, %v11383, 0
  %12520 = vmatprep.subr.bf16.mxu0 0
  %12521 = vmatpush1.bf16.msra.mxu0 0
  %12522 = vmatprep.subr.bf16.mxu0 0
  %12523 = vmatpush1.bf16.msra.mxu0 0
  %12524 = vmatprep.subr.bf16.mxu0 0
  %12525 = vmatpush1.bf16.msra.mxu0 0
  %12526 = vmatprep.subr.bf16.mxu0 0
  %12527 = vmatpush1.bf16.msra.mxu0 0
  %12528 = vmatprep.subr.bf16.mxu0 0
  %12529 = vmatpush1.bf16.msra.mxu0 0
  %12530 = vmatprep.subr.bf16.mxu0 0
  %12531 = vmatpush1.bf16.msra.mxu0 0
  %12532 = vmatprep.subr.bf16.mxu0 0
  %12533 = vmatpush1.bf16.msra.mxu0 0
  %12534 = vmatprep.subr.bf16.mxu0 0
  %12535 = vmatpush1.bf16.msra.mxu0 %v12515
  %12536 = vmatprep.subr.bf16.mxu0 0
  %12537 = vmatpush2.bf16.msra.mxu0 0
  %12538 = vmatprep.subr.bf16.mxu0 0
  %12539 = vmatpush2.bf16.msra.mxu0 0
  %12540 = vmatprep.subr.bf16.mxu0 0
  %12541 = vmatpush2.bf16.msra.mxu0 0
  %12542 = vmatprep.subr.bf16.mxu0 0
  %12543 = vmatpush2.bf16.msra.mxu0 0
  %12544 = vmatprep.subr.bf16.mxu0 0
  %12545 = vmatpush2.bf16.msra.mxu0 0
  %12546 = vmatprep.subr.bf16.mxu0 0
  %12547 = vmatpush2.bf16.msra.mxu0 0
  %12548 = vmatprep.subr.bf16.mxu0 0
  %12549 = vmatpush2.bf16.msra.mxu0 0
  %12550 = vmatprep.subr.bf16.mxu0 0
  %12551 = vmatpush2.bf16.msra.mxu0 0
  %12552 = vmatprep.mubr.bf16.mxu0 0
  %12553 = vmatmul.mubr.bf16.gmra.mxu0 %v12518
  %v12554 = vpop.f32.mrf.mxu0
  %v12555 = vadd.f32 0.0, %v12554
  %v12556 = vpop.f32.mrf.mxu0
  %v12557 = vpop.f32.mrf.mxu0
  %v12558 = vadd.f32 0.0, %v12557
  %v12559 = vpop.f32.mrf.mxu0
  %12560 = vdwg.mxu0
  %v12561 = vadd.f32 %v12506, %v12555
  %v12562 = vadd.f32 %v12507, %v12558
  %s12563 = scalar_lea.vmem %s2, 168
  %v12564 = vld [vmem:[%s12563] sm:$0xf]
  %v12565 = vld [vmem:[%s12563 + $0x4] sm:$0xf]
  %v12568 = vunpack.c.l.b16 %v12564
  %v12569 = vunpack.c.l.b16 %v12565
  %v12570 = vpack.c.b16 %v12569, %v12568
  %v12573 = vsel %vm11423, %v11384, 0
  %12575 = vmatprep.subr.bf16.mxu0 0
  %12576 = vmatpush1.bf16.msra.mxu0 0
  %12577 = vmatprep.subr.bf16.mxu0 0
  %12578 = vmatpush1.bf16.msra.mxu0 0
  %12579 = vmatprep.subr.bf16.mxu0 0
  %12580 = vmatpush1.bf16.msra.mxu0 0
  %12581 = vmatprep.subr.bf16.mxu0 0
  %12582 = vmatpush1.bf16.msra.mxu0 0
  %12583 = vmatprep.subr.bf16.mxu0 0
  %12584 = vmatpush1.bf16.msra.mxu0 0
  %12585 = vmatprep.subr.bf16.mxu0 0
  %12586 = vmatpush1.bf16.msra.mxu0 0
  %12587 = vmatprep.subr.bf16.mxu0 0
  %12588 = vmatpush1.bf16.msra.mxu0 0
  %12589 = vmatprep.subr.bf16.mxu0 0
  %12590 = vmatpush1.bf16.msra.mxu0 %v12570
  %12591 = vmatprep.subr.bf16.mxu0 0
  %12592 = vmatpush2.bf16.msra.mxu0 0
  %12593 = vmatprep.subr.bf16.mxu0 0
  %12594 = vmatpush2.bf16.msra.mxu0 0
  %12595 = vmatprep.subr.bf16.mxu0 0
  %12596 = vmatpush2.bf16.msra.mxu0 0
  %12597 = vmatprep.subr.bf16.mxu0 0
  %12598 = vmatpush2.bf16.msra.mxu0 0
  %12599 = vmatprep.subr.bf16.mxu0 0
  %12600 = vmatpush2.bf16.msra.mxu0 0
  %12601 = vmatprep.subr.bf16.mxu0 0
  %12602 = vmatpush2.bf16.msra.mxu0 0
  %12603 = vmatprep.subr.bf16.mxu0 0
  %12604 = vmatpush2.bf16.msra.mxu0 0
  %12605 = vmatprep.subr.bf16.mxu0 0
  %12606 = vmatpush2.bf16.msra.mxu0 0
  %12607 = vmatprep.mubr.bf16.mxu0 0
  %12608 = vmatmul.mubr.bf16.gmra.mxu0 %v12573
  %v12609 = vpop.f32.mrf.mxu0
  %v12610 = vadd.f32 0.0, %v12609
  %v12611 = vpop.f32.mrf.mxu0
  %v12612 = vpop.f32.mrf.mxu0
  %v12613 = vadd.f32 0.0, %v12612
  %v12614 = vpop.f32.mrf.mxu0
  %12615 = vdwg.mxu0
  %v12616 = vadd.f32 %v12561, %v12610
  %v12617 = vadd.f32 %v12562, %v12613
  %s12618 = scalar_lea.vmem %s2, 176
  %v12619 = vld [vmem:[%s12618] sm:$0xf]
  %v12620 = vld [vmem:[%s12618 + $0x4] sm:$0xf]
  %v12623 = vunpack.c.l.b16 %v12619
  %v12624 = vunpack.c.l.b16 %v12620
  %v12625 = vpack.c.b16 %v12624, %v12623
  %v12628 = vsel %vm11423, %v11385, 0
  %12630 = vmatprep.subr.bf16.mxu0 0
  %12631 = vmatpush1.bf16.msra.mxu0 0
  %12632 = vmatprep.subr.bf16.mxu0 0
  %12633 = vmatpush1.bf16.msra.mxu0 0
  %12634 = vmatprep.subr.bf16.mxu0 0
  %12635 = vmatpush1.bf16.msra.mxu0 0
  %12636 = vmatprep.subr.bf16.mxu0 0
  %12637 = vmatpush1.bf16.msra.mxu0 0
  %12638 = vmatprep.subr.bf16.mxu0 0
  %12639 = vmatpush1.bf16.msra.mxu0 0
  %12640 = vmatprep.subr.bf16.mxu0 0
  %12641 = vmatpush1.bf16.msra.mxu0 0
  %12642 = vmatprep.subr.bf16.mxu0 0
  %12643 = vmatpush1.bf16.msra.mxu0 0
  %12644 = vmatprep.subr.bf16.mxu0 0
  %12645 = vmatpush1.bf16.msra.mxu0 %v12625
  %12646 = vmatprep.subr.bf16.mxu0 0
  %12647 = vmatpush2.bf16.msra.mxu0 0
  %12648 = vmatprep.subr.bf16.mxu0 0
  %12649 = vmatpush2.bf16.msra.mxu0 0
  %12650 = vmatprep.subr.bf16.mxu0 0
  %12651 = vmatpush2.bf16.msra.mxu0 0
  %12652 = vmatprep.subr.bf16.mxu0 0
  %12653 = vmatpush2.bf16.msra.mxu0 0
  %12654 = vmatprep.subr.bf16.mxu0 0
  %12655 = vmatpush2.bf16.msra.mxu0 0
  %12656 = vmatprep.subr.bf16.mxu0 0
  %12657 = vmatpush2.bf16.msra.mxu0 0
  %12658 = vmatprep.subr.bf16.mxu0 0
  %12659 = vmatpush2.bf16.msra.mxu0 0
  %12660 = vmatprep.subr.bf16.mxu0 0
  %12661 = vmatpush2.bf16.msra.mxu0 0
  %12662 = vmatprep.mubr.bf16.mxu0 0
  %12663 = vmatmul.mubr.bf16.gmra.mxu0 %v12628
  %v12664 = vpop.f32.mrf.mxu0
  %v12665 = vadd.f32 0.0, %v12664
  %v12666 = vpop.f32.mrf.mxu0
  %v12667 = vpop.f32.mrf.mxu0
  %v12668 = vadd.f32 0.0, %v12667
  %v12669 = vpop.f32.mrf.mxu0
  %12670 = vdwg.mxu0
  %v12671 = vadd.f32 %v12616, %v12665
  %v12672 = vadd.f32 %v12617, %v12668
  %s12673 = scalar_lea.vmem %s2, 184
  %v12674 = vld [vmem:[%s12673] sm:$0xf]
  %v12675 = vld [vmem:[%s12673 + $0x4] sm:$0xf]
  %v12678 = vunpack.c.l.b16 %v12674
  %v12679 = vunpack.c.l.b16 %v12675
  %v12680 = vpack.c.b16 %v12679, %v12678
  %v12683 = vsel %vm11423, %v11386, 0
  %12685 = vmatprep.subr.bf16.mxu0 0
  %12686 = vmatpush1.bf16.msra.mxu0 0
  %12687 = vmatprep.subr.bf16.mxu0 0
  %12688 = vmatpush1.bf16.msra.mxu0 0
  %12689 = vmatprep.subr.bf16.mxu0 0
  %12690 = vmatpush1.bf16.msra.mxu0 0
  %12691 = vmatprep.subr.bf16.mxu0 0
  %12692 = vmatpush1.bf16.msra.mxu0 0
  %12693 = vmatprep.subr.bf16.mxu0 0
  %12694 = vmatpush1.bf16.msra.mxu0 0
  %12695 = vmatprep.subr.bf16.mxu0 0
  %12696 = vmatpush1.bf16.msra.mxu0 0
  %12697 = vmatprep.subr.bf16.mxu0 0
  %12698 = vmatpush1.bf16.msra.mxu0 0
  %12699 = vmatprep.subr.bf16.mxu0 0
  %12700 = vmatpush1.bf16.msra.mxu0 %v12680
  %12701 = vmatprep.subr.bf16.mxu0 0
  %12702 = vmatpush2.bf16.msra.mxu0 0
  %12703 = vmatprep.subr.bf16.mxu0 0
  %12704 = vmatpush2.bf16.msra.mxu0 0
  %12705 = vmatprep.subr.bf16.mxu0 0
  %12706 = vmatpush2.bf16.msra.mxu0 0
  %12707 = vmatprep.subr.bf16.mxu0 0
  %12708 = vmatpush2.bf16.msra.mxu0 0
  %12709 = vmatprep.subr.bf16.mxu0 0
  %12710 = vmatpush2.bf16.msra.mxu0 0
  %12711 = vmatprep.subr.bf16.mxu0 0
  %12712 = vmatpush2.bf16.msra.mxu0 0
  %12713 = vmatprep.subr.bf16.mxu0 0
  %12714 = vmatpush2.bf16.msra.mxu0 0
  %12715 = vmatprep.subr.bf16.mxu0 0
  %12716 = vmatpush2.bf16.msra.mxu0 0
  %12717 = vmatprep.mubr.bf16.mxu0 0
  %12718 = vmatmul.mubr.bf16.gmra.mxu0 %v12683
  %v12719 = vpop.f32.mrf.mxu0
  %v12720 = vadd.f32 0.0, %v12719
  %v12721 = vpop.f32.mrf.mxu0
  %v12722 = vpop.f32.mrf.mxu0
  %v12723 = vadd.f32 0.0, %v12722
  %v12724 = vpop.f32.mrf.mxu0
  %12725 = vdwg.mxu0
  %v12726 = vadd.f32 %v12671, %v12720
  %v12727 = vadd.f32 %v12672, %v12723
  %s12728 = scalar_lea.vmem %s2, 192
  %v12729 = vld [vmem:[%s12728] sm:$0xf]
  %v12730 = vld [vmem:[%s12728 + $0x4] sm:$0xf]
  %v12733 = vunpack.c.l.b16 %v12729
  %v12734 = vunpack.c.l.b16 %v12730
  %v12735 = vpack.c.b16 %v12734, %v12733
  %v12738 = vsel %vm11423, %v11387, 0
  %12740 = vmatprep.subr.bf16.mxu0 0
  %12741 = vmatpush1.bf16.msra.mxu0 0
  %12742 = vmatprep.subr.bf16.mxu0 0
  %12743 = vmatpush1.bf16.msra.mxu0 0
  %12744 = vmatprep.subr.bf16.mxu0 0
  %12745 = vmatpush1.bf16.msra.mxu0 0
  %12746 = vmatprep.subr.bf16.mxu0 0
  %12747 = vmatpush1.bf16.msra.mxu0 0
  %12748 = vmatprep.subr.bf16.mxu0 0
  %12749 = vmatpush1.bf16.msra.mxu0 0
  %12750 = vmatprep.subr.bf16.mxu0 0
  %12751 = vmatpush1.bf16.msra.mxu0 0
  %12752 = vmatprep.subr.bf16.mxu0 0
  %12753 = vmatpush1.bf16.msra.mxu0 0
  %12754 = vmatprep.subr.bf16.mxu0 0
  %12755 = vmatpush1.bf16.msra.mxu0 %v12735
  %12756 = vmatprep.subr.bf16.mxu0 0
  %12757 = vmatpush2.bf16.msra.mxu0 0
  %12758 = vmatprep.subr.bf16.mxu0 0
  %12759 = vmatpush2.bf16.msra.mxu0 0
  %12760 = vmatprep.subr.bf16.mxu0 0
  %12761 = vmatpush2.bf16.msra.mxu0 0
  %12762 = vmatprep.subr.bf16.mxu0 0
  %12763 = vmatpush2.bf16.msra.mxu0 0
  %12764 = vmatprep.subr.bf16.mxu0 0
  %12765 = vmatpush2.bf16.msra.mxu0 0
  %12766 = vmatprep.subr.bf16.mxu0 0
  %12767 = vmatpush2.bf16.msra.mxu0 0
  %12768 = vmatprep.subr.bf16.mxu0 0
  %12769 = vmatpush2.bf16.msra.mxu0 0
  %12770 = vmatprep.subr.bf16.mxu0 0
  %12771 = vmatpush2.bf16.msra.mxu0 0
  %12772 = vmatprep.mubr.bf16.mxu0 0
  %12773 = vmatmul.mubr.bf16.gmra.mxu0 %v12738
  %v12774 = vpop.f32.mrf.mxu0
  %v12775 = vadd.f32 0.0, %v12774
  %v12776 = vpop.f32.mrf.mxu0
  %v12777 = vpop.f32.mrf.mxu0
  %v12778 = vadd.f32 0.0, %v12777
  %v12779 = vpop.f32.mrf.mxu0
  %12780 = vdwg.mxu0
  %v12781 = vadd.f32 %v12726, %v12775
  %v12782 = vadd.f32 %v12727, %v12778
  %s12783 = scalar_lea.vmem %s2, 200
  %v12784 = vld [vmem:[%s12783] sm:$0xf]
  %v12785 = vld [vmem:[%s12783 + $0x4] sm:$0xf]
  %v12788 = vunpack.c.l.b16 %v12784
  %v12789 = vunpack.c.l.b16 %v12785
  %v12790 = vpack.c.b16 %v12789, %v12788
  %v12793 = vsel %vm11423, %v11388, 0
  %12795 = vmatprep.subr.bf16.mxu0 0
  %12796 = vmatpush1.bf16.msra.mxu0 0
  %12797 = vmatprep.subr.bf16.mxu0 0
  %12798 = vmatpush1.bf16.msra.mxu0 0
  %12799 = vmatprep.subr.bf16.mxu0 0
  %12800 = vmatpush1.bf16.msra.mxu0 0
  %12801 = vmatprep.subr.bf16.mxu0 0
  %12802 = vmatpush1.bf16.msra.mxu0 0
  %12803 = vmatprep.subr.bf16.mxu0 0
  %12804 = vmatpush1.bf16.msra.mxu0 0
  %12805 = vmatprep.subr.bf16.mxu0 0
  %12806 = vmatpush1.bf16.msra.mxu0 0
  %12807 = vmatprep.subr.bf16.mxu0 0
  %12808 = vmatpush1.bf16.msra.mxu0 0
  %12809 = vmatprep.subr.bf16.mxu0 0
  %12810 = vmatpush1.bf16.msra.mxu0 %v12790
  %12811 = vmatprep.subr.bf16.mxu0 0
  %12812 = vmatpush2.bf16.msra.mxu0 0
  %12813 = vmatprep.subr.bf16.mxu0 0
  %12814 = vmatpush2.bf16.msra.mxu0 0
  %12815 = vmatprep.subr.bf16.mxu0 0
  %12816 = vmatpush2.bf16.msra.mxu0 0
  %12817 = vmatprep.subr.bf16.mxu0 0
  %12818 = vmatpush2.bf16.msra.mxu0 0
  %12819 = vmatprep.subr.bf16.mxu0 0
  %12820 = vmatpush2.bf16.msra.mxu0 0
  %12821 = vmatprep.subr.bf16.mxu0 0
  %12822 = vmatpush2.bf16.msra.mxu0 0
  %12823 = vmatprep.subr.bf16.mxu0 0
  %12824 = vmatpush2.bf16.msra.mxu0 0
  %12825 = vmatprep.subr.bf16.mxu0 0
  %12826 = vmatpush2.bf16.msra.mxu0 0
  %12827 = vmatprep.mubr.bf16.mxu0 0
  %12828 = vmatmul.mubr.bf16.gmra.mxu0 %v12793
  %v12829 = vpop.f32.mrf.mxu0
  %v12830 = vadd.f32 0.0, %v12829
  %v12831 = vpop.f32.mrf.mxu0
  %v12832 = vpop.f32.mrf.mxu0
  %v12833 = vadd.f32 0.0, %v12832
  %v12834 = vpop.f32.mrf.mxu0
  %12835 = vdwg.mxu0
  %v12836 = vadd.f32 %v12781, %v12830
  %v12837 = vadd.f32 %v12782, %v12833
  %s12838 = scalar_lea.vmem %s2, 208
  %v12839 = vld [vmem:[%s12838] sm:$0xf]
  %v12840 = vld [vmem:[%s12838 + $0x4] sm:$0xf]
  %v12843 = vunpack.c.l.b16 %v12839
  %v12844 = vunpack.c.l.b16 %v12840
  %v12845 = vpack.c.b16 %v12844, %v12843
  %v12848 = vsel %vm11423, %v11389, 0
  %12850 = vmatprep.subr.bf16.mxu0 0
  %12851 = vmatpush1.bf16.msra.mxu0 0
  %12852 = vmatprep.subr.bf16.mxu0 0
  %12853 = vmatpush1.bf16.msra.mxu0 0
  %12854 = vmatprep.subr.bf16.mxu0 0
  %12855 = vmatpush1.bf16.msra.mxu0 0
  %12856 = vmatprep.subr.bf16.mxu0 0
  %12857 = vmatpush1.bf16.msra.mxu0 0
  %12858 = vmatprep.subr.bf16.mxu0 0
  %12859 = vmatpush1.bf16.msra.mxu0 0
  %12860 = vmatprep.subr.bf16.mxu0 0
  %12861 = vmatpush1.bf16.msra.mxu0 0
  %12862 = vmatprep.subr.bf16.mxu0 0
  %12863 = vmatpush1.bf16.msra.mxu0 0
  %12864 = vmatprep.subr.bf16.mxu0 0
  %12865 = vmatpush1.bf16.msra.mxu0 %v12845
  %12866 = vmatprep.subr.bf16.mxu0 0
  %12867 = vmatpush2.bf16.msra.mxu0 0
  %12868 = vmatprep.subr.bf16.mxu0 0
  %12869 = vmatpush2.bf16.msra.mxu0 0
  %12870 = vmatprep.subr.bf16.mxu0 0
  %12871 = vmatpush2.bf16.msra.mxu0 0
  %12872 = vmatprep.subr.bf16.mxu0 0
  %12873 = vmatpush2.bf16.msra.mxu0 0
  %12874 = vmatprep.subr.bf16.mxu0 0
  %12875 = vmatpush2.bf16.msra.mxu0 0
  %12876 = vmatprep.subr.bf16.mxu0 0
  %12877 = vmatpush2.bf16.msra.mxu0 0
  %12878 = vmatprep.subr.bf16.mxu0 0
  %12879 = vmatpush2.bf16.msra.mxu0 0
  %12880 = vmatprep.subr.bf16.mxu0 0
  %12881 = vmatpush2.bf16.msra.mxu0 0
  %12882 = vmatprep.mubr.bf16.mxu0 0
  %12883 = vmatmul.mubr.bf16.gmra.mxu0 %v12848
  %v12884 = vpop.f32.mrf.mxu0
  %v12885 = vadd.f32 0.0, %v12884
  %v12886 = vpop.f32.mrf.mxu0
  %v12887 = vpop.f32.mrf.mxu0
  %v12888 = vadd.f32 0.0, %v12887
  %v12889 = vpop.f32.mrf.mxu0
  %12890 = vdwg.mxu0
  %v12891 = vadd.f32 %v12836, %v12885
  %v12892 = vadd.f32 %v12837, %v12888
  %s12893 = scalar_lea.vmem %s2, 216
  %v12894 = vld [vmem:[%s12893] sm:$0xf]
  %v12895 = vld [vmem:[%s12893 + $0x4] sm:$0xf]
  %v12898 = vunpack.c.l.b16 %v12894
  %v12899 = vunpack.c.l.b16 %v12895
  %v12900 = vpack.c.b16 %v12899, %v12898
  %v12903 = vsel %vm11423, %v11390, 0
  %12905 = vmatprep.subr.bf16.mxu0 0
  %12906 = vmatpush1.bf16.msra.mxu0 0
  %12907 = vmatprep.subr.bf16.mxu0 0
  %12908 = vmatpush1.bf16.msra.mxu0 0
  %12909 = vmatprep.subr.bf16.mxu0 0
  %12910 = vmatpush1.bf16.msra.mxu0 0
  %12911 = vmatprep.subr.bf16.mxu0 0
  %12912 = vmatpush1.bf16.msra.mxu0 0
  %12913 = vmatprep.subr.bf16.mxu0 0
  %12914 = vmatpush1.bf16.msra.mxu0 0
  %12915 = vmatprep.subr.bf16.mxu0 0
  %12916 = vmatpush1.bf16.msra.mxu0 0
  %12917 = vmatprep.subr.bf16.mxu0 0
  %12918 = vmatpush1.bf16.msra.mxu0 0
  %12919 = vmatprep.subr.bf16.mxu0 0
  %12920 = vmatpush1.bf16.msra.mxu0 %v12900
  %12921 = vmatprep.subr.bf16.mxu0 0
  %12922 = vmatpush2.bf16.msra.mxu0 0
  %12923 = vmatprep.subr.bf16.mxu0 0
  %12924 = vmatpush2.bf16.msra.mxu0 0
  %12925 = vmatprep.subr.bf16.mxu0 0
  %12926 = vmatpush2.bf16.msra.mxu0 0
  %12927 = vmatprep.subr.bf16.mxu0 0
  %12928 = vmatpush2.bf16.msra.mxu0 0
  %12929 = vmatprep.subr.bf16.mxu0 0
  %12930 = vmatpush2.bf16.msra.mxu0 0
  %12931 = vmatprep.subr.bf16.mxu0 0
  %12932 = vmatpush2.bf16.msra.mxu0 0
  %12933 = vmatprep.subr.bf16.mxu0 0
  %12934 = vmatpush2.bf16.msra.mxu0 0
  %12935 = vmatprep.subr.bf16.mxu0 0
  %12936 = vmatpush2.bf16.msra.mxu0 0
  %12937 = vmatprep.mubr.bf16.mxu0 0
  %12938 = vmatmul.mubr.bf16.gmra.mxu0 %v12903
  %v12939 = vpop.f32.mrf.mxu0
  %v12940 = vadd.f32 0.0, %v12939
  %v12941 = vpop.f32.mrf.mxu0
  %v12942 = vpop.f32.mrf.mxu0
  %v12943 = vadd.f32 0.0, %v12942
  %v12944 = vpop.f32.mrf.mxu0
  %12945 = vdwg.mxu0
  %v12946 = vadd.f32 %v12891, %v12940
  %v12947 = vadd.f32 %v12892, %v12943
  %s12948 = scalar_lea.vmem %s2, 224
  %v12949 = vld [vmem:[%s12948] sm:$0xf]
  %v12950 = vld [vmem:[%s12948 + $0x4] sm:$0xf]
  %v12953 = vunpack.c.l.b16 %v12949
  %v12954 = vunpack.c.l.b16 %v12950
  %v12955 = vpack.c.b16 %v12954, %v12953
  %v12958 = vsel %vm11423, %v11391, 0
  %12960 = vmatprep.subr.bf16.mxu0 0
  %12961 = vmatpush1.bf16.msra.mxu0 0
  %12962 = vmatprep.subr.bf16.mxu0 0
  %12963 = vmatpush1.bf16.msra.mxu0 0
  %12964 = vmatprep.subr.bf16.mxu0 0
  %12965 = vmatpush1.bf16.msra.mxu0 0
  %12966 = vmatprep.subr.bf16.mxu0 0
  %12967 = vmatpush1.bf16.msra.mxu0 0
  %12968 = vmatprep.subr.bf16.mxu0 0
  %12969 = vmatpush1.bf16.msra.mxu0 0
  %12970 = vmatprep.subr.bf16.mxu0 0
  %12971 = vmatpush1.bf16.msra.mxu0 0
  %12972 = vmatprep.subr.bf16.mxu0 0
  %12973 = vmatpush1.bf16.msra.mxu0 0
  %12974 = vmatprep.subr.bf16.mxu0 0
  %12975 = vmatpush1.bf16.msra.mxu0 %v12955
  %12976 = vmatprep.subr.bf16.mxu0 0
  %12977 = vmatpush2.bf16.msra.mxu0 0
  %12978 = vmatprep.subr.bf16.mxu0 0
  %12979 = vmatpush2.bf16.msra.mxu0 0
  %12980 = vmatprep.subr.bf16.mxu0 0
  %12981 = vmatpush2.bf16.msra.mxu0 0
  %12982 = vmatprep.subr.bf16.mxu0 0
  %12983 = vmatpush2.bf16.msra.mxu0 0
  %12984 = vmatprep.subr.bf16.mxu0 0
  %12985 = vmatpush2.bf16.msra.mxu0 0
  %12986 = vmatprep.subr.bf16.mxu0 0
  %12987 = vmatpush2.bf16.msra.mxu0 0
  %12988 = vmatprep.subr.bf16.mxu0 0
  %12989 = vmatpush2.bf16.msra.mxu0 0
  %12990 = vmatprep.subr.bf16.mxu0 0
  %12991 = vmatpush2.bf16.msra.mxu0 0
  %12992 = vmatprep.mubr.bf16.mxu0 0
  %12993 = vmatmul.mubr.bf16.gmra.mxu0 %v12958
  %v12994 = vpop.f32.mrf.mxu0
  %v12995 = vadd.f32 0.0, %v12994
  %v12996 = vpop.f32.mrf.mxu0
  %v12997 = vpop.f32.mrf.mxu0
  %v12998 = vadd.f32 0.0, %v12997
  %v12999 = vpop.f32.mrf.mxu0
  %13000 = vdwg.mxu0
  %v13001 = vadd.f32 %v12946, %v12995
  %v13002 = vadd.f32 %v12947, %v12998
  %s13003 = scalar_lea.vmem %s2, 232
  %v13004 = vld [vmem:[%s13003] sm:$0xf]
  %v13005 = vld [vmem:[%s13003 + $0x4] sm:$0xf]
  %v13008 = vunpack.c.l.b16 %v13004
  %v13009 = vunpack.c.l.b16 %v13005
  %v13010 = vpack.c.b16 %v13009, %v13008
  %v13013 = vsel %vm11423, %v11392, 0
  %13015 = vmatprep.subr.bf16.mxu0 0
  %13016 = vmatpush1.bf16.msra.mxu0 0
  %13017 = vmatprep.subr.bf16.mxu0 0
  %13018 = vmatpush1.bf16.msra.mxu0 0
  %13019 = vmatprep.subr.bf16.mxu0 0
  %13020 = vmatpush1.bf16.msra.mxu0 0
  %13021 = vmatprep.subr.bf16.mxu0 0
  %13022 = vmatpush1.bf16.msra.mxu0 0
  %13023 = vmatprep.subr.bf16.mxu0 0
  %13024 = vmatpush1.bf16.msra.mxu0 0
  %13025 = vmatprep.subr.bf16.mxu0 0
  %13026 = vmatpush1.bf16.msra.mxu0 0
  %13027 = vmatprep.subr.bf16.mxu0 0
  %13028 = vmatpush1.bf16.msra.mxu0 0
  %13029 = vmatprep.subr.bf16.mxu0 0
  %13030 = vmatpush1.bf16.msra.mxu0 %v13010
  %13031 = vmatprep.subr.bf16.mxu0 0
  %13032 = vmatpush2.bf16.msra.mxu0 0
  %13033 = vmatprep.subr.bf16.mxu0 0
  %13034 = vmatpush2.bf16.msra.mxu0 0
  %13035 = vmatprep.subr.bf16.mxu0 0
  %13036 = vmatpush2.bf16.msra.mxu0 0
  %13037 = vmatprep.subr.bf16.mxu0 0
  %13038 = vmatpush2.bf16.msra.mxu0 0
  %13039 = vmatprep.subr.bf16.mxu0 0
  %13040 = vmatpush2.bf16.msra.mxu0 0
  %13041 = vmatprep.subr.bf16.mxu0 0
  %13042 = vmatpush2.bf16.msra.mxu0 0
  %13043 = vmatprep.subr.bf16.mxu0 0
  %13044 = vmatpush2.bf16.msra.mxu0 0
  %13045 = vmatprep.subr.bf16.mxu0 0
  %13046 = vmatpush2.bf16.msra.mxu0 0
  %13047 = vmatprep.mubr.bf16.mxu0 0
  %13048 = vmatmul.mubr.bf16.gmra.mxu0 %v13013
  %v13049 = vpop.f32.mrf.mxu0
  %v13050 = vadd.f32 0.0, %v13049
  %v13051 = vpop.f32.mrf.mxu0
  %v13052 = vpop.f32.mrf.mxu0
  %v13053 = vadd.f32 0.0, %v13052
  %v13054 = vpop.f32.mrf.mxu0
  %13055 = vdwg.mxu0
  %v13056 = vadd.f32 %v13001, %v13050
  %v13057 = vadd.f32 %v13002, %v13053
  %s13058 = scalar_lea.vmem %s2, 240
  %v13059 = vld [vmem:[%s13058] sm:$0xf]
  %v13060 = vld [vmem:[%s13058 + $0x4] sm:$0xf]
  %v13063 = vunpack.c.l.b16 %v13059
  %v13064 = vunpack.c.l.b16 %v13060
  %v13065 = vpack.c.b16 %v13064, %v13063
  %v13068 = vsel %vm11423, %v11393, 0
  %13070 = vmatprep.subr.bf16.mxu0 0
  %13071 = vmatpush1.bf16.msra.mxu0 0
  %13072 = vmatprep.subr.bf16.mxu0 0
  %13073 = vmatpush1.bf16.msra.mxu0 0
  %13074 = vmatprep.subr.bf16.mxu0 0
  %13075 = vmatpush1.bf16.msra.mxu0 0
  %13076 = vmatprep.subr.bf16.mxu0 0
  %13077 = vmatpush1.bf16.msra.mxu0 0
  %13078 = vmatprep.subr.bf16.mxu0 0
  %13079 = vmatpush1.bf16.msra.mxu0 0
  %13080 = vmatprep.subr.bf16.mxu0 0
  %13081 = vmatpush1.bf16.msra.mxu0 0
  %13082 = vmatprep.subr.bf16.mxu0 0
  %13083 = vmatpush1.bf16.msra.mxu0 0
  %13084 = vmatprep.subr.bf16.mxu0 0
  %13085 = vmatpush1.bf16.msra.mxu0 %v13065
  %13086 = vmatprep.subr.bf16.mxu0 0
  %13087 = vmatpush2.bf16.msra.mxu0 0
  %13088 = vmatprep.subr.bf16.mxu0 0
  %13089 = vmatpush2.bf16.msra.mxu0 0
  %13090 = vmatprep.subr.bf16.mxu0 0
  %13091 = vmatpush2.bf16.msra.mxu0 0
  %13092 = vmatprep.subr.bf16.mxu0 0
  %13093 = vmatpush2.bf16.msra.mxu0 0
  %13094 = vmatprep.subr.bf16.mxu0 0
  %13095 = vmatpush2.bf16.msra.mxu0 0
  %13096 = vmatprep.subr.bf16.mxu0 0
  %13097 = vmatpush2.bf16.msra.mxu0 0
  %13098 = vmatprep.subr.bf16.mxu0 0
  %13099 = vmatpush2.bf16.msra.mxu0 0
  %13100 = vmatprep.subr.bf16.mxu0 0
  %13101 = vmatpush2.bf16.msra.mxu0 0
  %13102 = vmatprep.mubr.bf16.mxu0 0
  %13103 = vmatmul.mubr.bf16.gmra.mxu0 %v13068
  %v13104 = vpop.f32.mrf.mxu0
  %v13105 = vadd.f32 0.0, %v13104
  %v13106 = vpop.f32.mrf.mxu0
  %v13107 = vpop.f32.mrf.mxu0
  %v13108 = vadd.f32 0.0, %v13107
  %v13109 = vpop.f32.mrf.mxu0
  %13110 = vdwg.mxu0
  %v13111 = vadd.f32 %v13056, %v13105
  %v13112 = vadd.f32 %v13057, %v13108
  %s13113 = scalar_lea.vmem %s2, 248
  %v13114 = vld [vmem:[%s13113] sm:$0xf]
  %v13115 = vld [vmem:[%s13113 + $0x4] sm:$0xf]
  %v13118 = vunpack.c.l.b16 %v13114
  %v13119 = vunpack.c.l.b16 %v13115
  %v13120 = vpack.c.b16 %v13119, %v13118
  %v13123 = vsel %vm11423, %v11394, 0
  %13125 = vmatprep.subr.bf16.mxu0 0
  %13126 = vmatpush1.bf16.msra.mxu0 0
  %13127 = vmatprep.subr.bf16.mxu0 0
  %13128 = vmatpush1.bf16.msra.mxu0 0
  %13129 = vmatprep.subr.bf16.mxu0 0
  %13130 = vmatpush1.bf16.msra.mxu0 0
  %13131 = vmatprep.subr.bf16.mxu0 0
  %13132 = vmatpush1.bf16.msra.mxu0 0
  %13133 = vmatprep.subr.bf16.mxu0 0
  %13134 = vmatpush1.bf16.msra.mxu0 0
  %13135 = vmatprep.subr.bf16.mxu0 0
  %13136 = vmatpush1.bf16.msra.mxu0 0
  %13137 = vmatprep.subr.bf16.mxu0 0
  %13138 = vmatpush1.bf16.msra.mxu0 0
  %13139 = vmatprep.subr.bf16.mxu0 0
  %13140 = vmatpush1.bf16.msra.mxu0 %v13120
  %13141 = vmatprep.subr.bf16.mxu0 0
  %13142 = vmatpush2.bf16.msra.mxu0 0
  %13143 = vmatprep.subr.bf16.mxu0 0
  %13144 = vmatpush2.bf16.msra.mxu0 0
  %13145 = vmatprep.subr.bf16.mxu0 0
  %13146 = vmatpush2.bf16.msra.mxu0 0
  %13147 = vmatprep.subr.bf16.mxu0 0
  %13148 = vmatpush2.bf16.msra.mxu0 0
  %13149 = vmatprep.subr.bf16.mxu0 0
  %13150 = vmatpush2.bf16.msra.mxu0 0
  %13151 = vmatprep.subr.bf16.mxu0 0
  %13152 = vmatpush2.bf16.msra.mxu0 0
  %13153 = vmatprep.subr.bf16.mxu0 0
  %13154 = vmatpush2.bf16.msra.mxu0 0
  %13155 = vmatprep.subr.bf16.mxu0 0
  %13156 = vmatpush2.bf16.msra.mxu0 0
  %13157 = vmatprep.mubr.bf16.mxu0 0
  %13158 = vmatmul.mubr.bf16.gmra.mxu0 %v13123
  %v13159 = vpop.f32.mrf.mxu0
  %v13160 = vadd.f32 0.0, %v13159
  %v13161 = vpop.f32.mrf.mxu0
  %v13162 = vpop.f32.mrf.mxu0
  %v13163 = vadd.f32 0.0, %v13162
  %v13164 = vpop.f32.mrf.mxu0
  %13165 = vdwg.mxu0
  %v13166 = vadd.f32 %v13111, %v13160
  %v13167 = vadd.f32 %v13112, %v13163
  %s13168 = scalar_lea.vmem %s2, 256
  %v13169 = vld [vmem:[%s13168] sm:$0xf]
  %v13170 = vld [vmem:[%s13168 + $0x4] sm:$0xf]
  %v13173 = vunpack.c.l.b16 %v13169
  %v13174 = vunpack.c.l.b16 %v13170
  %v13175 = vpack.c.b16 %v13174, %v13173
  %v13178 = vsel %vm11423, %v11395, 0
  %13180 = vmatprep.subr.bf16.mxu0 0
  %13181 = vmatpush1.bf16.msra.mxu0 0
  %13182 = vmatprep.subr.bf16.mxu0 0
  %13183 = vmatpush1.bf16.msra.mxu0 0
  %13184 = vmatprep.subr.bf16.mxu0 0
  %13185 = vmatpush1.bf16.msra.mxu0 0
  %13186 = vmatprep.subr.bf16.mxu0 0
  %13187 = vmatpush1.bf16.msra.mxu0 0
  %13188 = vmatprep.subr.bf16.mxu0 0
  %13189 = vmatpush1.bf16.msra.mxu0 0
  %13190 = vmatprep.subr.bf16.mxu0 0
  %13191 = vmatpush1.bf16.msra.mxu0 0
  %13192 = vmatprep.subr.bf16.mxu0 0
  %13193 = vmatpush1.bf16.msra.mxu0 0
  %13194 = vmatprep.subr.bf16.mxu0 0
  %13195 = vmatpush1.bf16.msra.mxu0 %v13175
  %13196 = vmatprep.subr.bf16.mxu0 0
  %13197 = vmatpush2.bf16.msra.mxu0 0
  %13198 = vmatprep.subr.bf16.mxu0 0
  %13199 = vmatpush2.bf16.msra.mxu0 0
  %13200 = vmatprep.subr.bf16.mxu0 0
  %13201 = vmatpush2.bf16.msra.mxu0 0
  %13202 = vmatprep.subr.bf16.mxu0 0
  %13203 = vmatpush2.bf16.msra.mxu0 0
  %13204 = vmatprep.subr.bf16.mxu0 0
  %13205 = vmatpush2.bf16.msra.mxu0 0
  %13206 = vmatprep.subr.bf16.mxu0 0
  %13207 = vmatpush2.bf16.msra.mxu0 0
  %13208 = vmatprep.subr.bf16.mxu0 0
  %13209 = vmatpush2.bf16.msra.mxu0 0
  %13210 = vmatprep.subr.bf16.mxu0 0
  %13211 = vmatpush2.bf16.msra.mxu0 0
  %13212 = vmatprep.mubr.bf16.mxu0 0
  %13213 = vmatmul.mubr.bf16.gmra.mxu0 %v13178
  %v13214 = vpop.f32.mrf.mxu0
  %v13215 = vadd.f32 0.0, %v13214
  %v13216 = vpop.f32.mrf.mxu0
  %v13217 = vpop.f32.mrf.mxu0
  %v13218 = vadd.f32 0.0, %v13217
  %v13219 = vpop.f32.mrf.mxu0
  %13220 = vdwg.mxu0
  %v13221 = vadd.f32 %v13166, %v13215
  %v13222 = vadd.f32 %v13167, %v13218
  %s13223 = scalar_lea.vmem %s2, 264
  %v13224 = vld [vmem:[%s13223] sm:$0xf]
  %v13225 = vld [vmem:[%s13223 + $0x4] sm:$0xf]
  %v13228 = vunpack.c.l.b16 %v13224
  %v13229 = vunpack.c.l.b16 %v13225
  %v13230 = vpack.c.b16 %v13229, %v13228
  %v13233 = vsel %vm11423, %v11396, 0
  %13235 = vmatprep.subr.bf16.mxu0 0
  %13236 = vmatpush1.bf16.msra.mxu0 0
  %13237 = vmatprep.subr.bf16.mxu0 0
  %13238 = vmatpush1.bf16.msra.mxu0 0
  %13239 = vmatprep.subr.bf16.mxu0 0
  %13240 = vmatpush1.bf16.msra.mxu0 0
  %13241 = vmatprep.subr.bf16.mxu0 0
  %13242 = vmatpush1.bf16.msra.mxu0 0
  %13243 = vmatprep.subr.bf16.mxu0 0
  %13244 = vmatpush1.bf16.msra.mxu0 0
  %13245 = vmatprep.subr.bf16.mxu0 0
  %13246 = vmatpush1.bf16.msra.mxu0 0
  %13247 = vmatprep.subr.bf16.mxu0 0
  %13248 = vmatpush1.bf16.msra.mxu0 0
  %13249 = vmatprep.subr.bf16.mxu0 0
  %13250 = vmatpush1.bf16.msra.mxu0 %v13230
  %13251 = vmatprep.subr.bf16.mxu0 0
  %13252 = vmatpush2.bf16.msra.mxu0 0
  %13253 = vmatprep.subr.bf16.mxu0 0
  %13254 = vmatpush2.bf16.msra.mxu0 0
  %13255 = vmatprep.subr.bf16.mxu0 0
  %13256 = vmatpush2.bf16.msra.mxu0 0
  %13257 = vmatprep.subr.bf16.mxu0 0
  %13258 = vmatpush2.bf16.msra.mxu0 0
  %13259 = vmatprep.subr.bf16.mxu0 0
  %13260 = vmatpush2.bf16.msra.mxu0 0
  %13261 = vmatprep.subr.bf16.mxu0 0
  %13262 = vmatpush2.bf16.msra.mxu0 0
  %13263 = vmatprep.subr.bf16.mxu0 0
  %13264 = vmatpush2.bf16.msra.mxu0 0
  %13265 = vmatprep.subr.bf16.mxu0 0
  %13266 = vmatpush2.bf16.msra.mxu0 0
  %13267 = vmatprep.mubr.bf16.mxu0 0
  %13268 = vmatmul.mubr.bf16.gmra.mxu0 %v13233
  %v13269 = vpop.f32.mrf.mxu0
  %v13270 = vadd.f32 0.0, %v13269
  %v13271 = vpop.f32.mrf.mxu0
  %v13272 = vpop.f32.mrf.mxu0
  %v13273 = vadd.f32 0.0, %v13272
  %v13274 = vpop.f32.mrf.mxu0
  %13275 = vdwg.mxu0
  %v13276 = vadd.f32 %v13221, %v13270
  %v13277 = vadd.f32 %v13222, %v13273
  %s13278 = scalar_lea.vmem %s2, 272
  %v13279 = vld [vmem:[%s13278] sm:$0xf]
  %v13280 = vld [vmem:[%s13278 + $0x4] sm:$0xf]
  %v13283 = vunpack.c.l.b16 %v13279
  %v13284 = vunpack.c.l.b16 %v13280
  %v13285 = vpack.c.b16 %v13284, %v13283
  %v13288 = vsel %vm11423, %v11397, 0
  %13290 = vmatprep.subr.bf16.mxu0 0
  %13291 = vmatpush1.bf16.msra.mxu0 0
  %13292 = vmatprep.subr.bf16.mxu0 0
  %13293 = vmatpush1.bf16.msra.mxu0 0
  %13294 = vmatprep.subr.bf16.mxu0 0
  %13295 = vmatpush1.bf16.msra.mxu0 0
  %13296 = vmatprep.subr.bf16.mxu0 0
  %13297 = vmatpush1.bf16.msra.mxu0 0
  %13298 = vmatprep.subr.bf16.mxu0 0
  %13299 = vmatpush1.bf16.msra.mxu0 0
  %13300 = vmatprep.subr.bf16.mxu0 0
  %13301 = vmatpush1.bf16.msra.mxu0 0
  %13302 = vmatprep.subr.bf16.mxu0 0
  %13303 = vmatpush1.bf16.msra.mxu0 0
  %13304 = vmatprep.subr.bf16.mxu0 0
  %13305 = vmatpush1.bf16.msra.mxu0 %v13285
  %13306 = vmatprep.subr.bf16.mxu0 0
  %13307 = vmatpush2.bf16.msra.mxu0 0
  %13308 = vmatprep.subr.bf16.mxu0 0
  %13309 = vmatpush2.bf16.msra.mxu0 0
  %13310 = vmatprep.subr.bf16.mxu0 0
  %13311 = vmatpush2.bf16.msra.mxu0 0
  %13312 = vmatprep.subr.bf16.mxu0 0
  %13313 = vmatpush2.bf16.msra.mxu0 0
  %13314 = vmatprep.subr.bf16.mxu0 0
  %13315 = vmatpush2.bf16.msra.mxu0 0
  %13316 = vmatprep.subr.bf16.mxu0 0
  %13317 = vmatpush2.bf16.msra.mxu0 0
  %13318 = vmatprep.subr.bf16.mxu0 0
  %13319 = vmatpush2.bf16.msra.mxu0 0
  %13320 = vmatprep.subr.bf16.mxu0 0
  %13321 = vmatpush2.bf16.msra.mxu0 0
  %13322 = vmatprep.mubr.bf16.mxu0 0
  %13323 = vmatmul.mubr.bf16.gmra.mxu0 %v13288
  %v13324 = vpop.f32.mrf.mxu0
  %v13325 = vadd.f32 0.0, %v13324
  %v13326 = vpop.f32.mrf.mxu0
  %v13327 = vpop.f32.mrf.mxu0
  %v13328 = vadd.f32 0.0, %v13327
  %v13329 = vpop.f32.mrf.mxu0
  %13330 = vdwg.mxu0
  %v13331 = vadd.f32 %v13276, %v13325
  %v13332 = vadd.f32 %v13277, %v13328
  %s13333 = scalar_lea.vmem %s2, 280
  %v13334 = vld [vmem:[%s13333] sm:$0xf]
  %v13335 = vld [vmem:[%s13333 + $0x4] sm:$0xf]
  %v13338 = vunpack.c.l.b16 %v13334
  %v13339 = vunpack.c.l.b16 %v13335
  %v13340 = vpack.c.b16 %v13339, %v13338
  %v13343 = vsel %vm11423, %v11398, 0
  %13345 = vmatprep.subr.bf16.mxu0 0
  %13346 = vmatpush1.bf16.msra.mxu0 0
  %13347 = vmatprep.subr.bf16.mxu0 0
  %13348 = vmatpush1.bf16.msra.mxu0 0
  %13349 = vmatprep.subr.bf16.mxu0 0
  %13350 = vmatpush1.bf16.msra.mxu0 0
  %13351 = vmatprep.subr.bf16.mxu0 0
  %13352 = vmatpush1.bf16.msra.mxu0 0
  %13353 = vmatprep.subr.bf16.mxu0 0
  %13354 = vmatpush1.bf16.msra.mxu0 0
  %13355 = vmatprep.subr.bf16.mxu0 0
  %13356 = vmatpush1.bf16.msra.mxu0 0
  %13357 = vmatprep.subr.bf16.mxu0 0
  %13358 = vmatpush1.bf16.msra.mxu0 0
  %13359 = vmatprep.subr.bf16.mxu0 0
  %13360 = vmatpush1.bf16.msra.mxu0 %v13340
  %13361 = vmatprep.subr.bf16.mxu0 0
  %13362 = vmatpush2.bf16.msra.mxu0 0
  %13363 = vmatprep.subr.bf16.mxu0 0
  %13364 = vmatpush2.bf16.msra.mxu0 0
  %13365 = vmatprep.subr.bf16.mxu0 0
  %13366 = vmatpush2.bf16.msra.mxu0 0
  %13367 = vmatprep.subr.bf16.mxu0 0
  %13368 = vmatpush2.bf16.msra.mxu0 0
  %13369 = vmatprep.subr.bf16.mxu0 0
  %13370 = vmatpush2.bf16.msra.mxu0 0
  %13371 = vmatprep.subr.bf16.mxu0 0
  %13372 = vmatpush2.bf16.msra.mxu0 0
  %13373 = vmatprep.subr.bf16.mxu0 0
  %13374 = vmatpush2.bf16.msra.mxu0 0
  %13375 = vmatprep.subr.bf16.mxu0 0
  %13376 = vmatpush2.bf16.msra.mxu0 0
  %13377 = vmatprep.mubr.bf16.mxu0 0
  %13378 = vmatmul.mubr.bf16.gmra.mxu0 %v13343
  %v13379 = vpop.f32.mrf.mxu0
  %v13380 = vadd.f32 0.0, %v13379
  %v13381 = vpop.f32.mrf.mxu0
  %v13382 = vpop.f32.mrf.mxu0
  %v13383 = vadd.f32 0.0, %v13382
  %v13384 = vpop.f32.mrf.mxu0
  %13385 = vdwg.mxu0
  %v13386 = vadd.f32 %v13331, %v13380
  %v13387 = vadd.f32 %v13332, %v13383
  %s13388 = scalar_lea.vmem %s2, 288
  %v13389 = vld [vmem:[%s13388] sm:$0xf]
  %v13390 = vld [vmem:[%s13388 + $0x4] sm:$0xf]
  %v13393 = vunpack.c.l.b16 %v13389
  %v13394 = vunpack.c.l.b16 %v13390
  %v13395 = vpack.c.b16 %v13394, %v13393
  %v13398 = vsel %vm11423, %v11399, 0
  %13400 = vmatprep.subr.bf16.mxu0 0
  %13401 = vmatpush1.bf16.msra.mxu0 0
  %13402 = vmatprep.subr.bf16.mxu0 0
  %13403 = vmatpush1.bf16.msra.mxu0 0
  %13404 = vmatprep.subr.bf16.mxu0 0
  %13405 = vmatpush1.bf16.msra.mxu0 0
  %13406 = vmatprep.subr.bf16.mxu0 0
  %13407 = vmatpush1.bf16.msra.mxu0 0
  %13408 = vmatprep.subr.bf16.mxu0 0
  %13409 = vmatpush1.bf16.msra.mxu0 0
  %13410 = vmatprep.subr.bf16.mxu0 0
  %13411 = vmatpush1.bf16.msra.mxu0 0
  %13412 = vmatprep.subr.bf16.mxu0 0
  %13413 = vmatpush1.bf16.msra.mxu0 0
  %13414 = vmatprep.subr.bf16.mxu0 0
  %13415 = vmatpush1.bf16.msra.mxu0 %v13395
  %13416 = vmatprep.subr.bf16.mxu0 0
  %13417 = vmatpush2.bf16.msra.mxu0 0
  %13418 = vmatprep.subr.bf16.mxu0 0
  %13419 = vmatpush2.bf16.msra.mxu0 0
  %13420 = vmatprep.subr.bf16.mxu0 0
  %13421 = vmatpush2.bf16.msra.mxu0 0
  %13422 = vmatprep.subr.bf16.mxu0 0
  %13423 = vmatpush2.bf16.msra.mxu0 0
  %13424 = vmatprep.subr.bf16.mxu0 0
  %13425 = vmatpush2.bf16.msra.mxu0 0
  %13426 = vmatprep.subr.bf16.mxu0 0
  %13427 = vmatpush2.bf16.msra.mxu0 0
  %13428 = vmatprep.subr.bf16.mxu0 0
  %13429 = vmatpush2.bf16.msra.mxu0 0
  %13430 = vmatprep.subr.bf16.mxu0 0
  %13431 = vmatpush2.bf16.msra.mxu0 0
  %13432 = vmatprep.mubr.bf16.mxu0 0
  %13433 = vmatmul.mubr.bf16.gmra.mxu0 %v13398
  %v13434 = vpop.f32.mrf.mxu0
  %v13435 = vadd.f32 0.0, %v13434
  %v13436 = vpop.f32.mrf.mxu0
  %v13437 = vpop.f32.mrf.mxu0
  %v13438 = vadd.f32 0.0, %v13437
  %v13439 = vpop.f32.mrf.mxu0
  %13440 = vdwg.mxu0
  %v13441 = vadd.f32 %v13386, %v13435
  %v13442 = vadd.f32 %v13387, %v13438
  %s13443 = scalar_lea.vmem %s2, 296
  %v13444 = vld [vmem:[%s13443] sm:$0xf]
  %v13445 = vld [vmem:[%s13443 + $0x4] sm:$0xf]
  %v13448 = vunpack.c.l.b16 %v13444
  %v13449 = vunpack.c.l.b16 %v13445
  %v13450 = vpack.c.b16 %v13449, %v13448
  %v13453 = vsel %vm11423, %v11400, 0
  %13455 = vmatprep.subr.bf16.mxu0 0
  %13456 = vmatpush1.bf16.msra.mxu0 0
  %13457 = vmatprep.subr.bf16.mxu0 0
  %13458 = vmatpush1.bf16.msra.mxu0 0
  %13459 = vmatprep.subr.bf16.mxu0 0
  %13460 = vmatpush1.bf16.msra.mxu0 0
  %13461 = vmatprep.subr.bf16.mxu0 0
  %13462 = vmatpush1.bf16.msra.mxu0 0
  %13463 = vmatprep.subr.bf16.mxu0 0
  %13464 = vmatpush1.bf16.msra.mxu0 0
  %13465 = vmatprep.subr.bf16.mxu0 0
  %13466 = vmatpush1.bf16.msra.mxu0 0
  %13467 = vmatprep.subr.bf16.mxu0 0
  %13468 = vmatpush1.bf16.msra.mxu0 0
  %13469 = vmatprep.subr.bf16.mxu0 0
  %13470 = vmatpush1.bf16.msra.mxu0 %v13450
  %13471 = vmatprep.subr.bf16.mxu0 0
  %13472 = vmatpush2.bf16.msra.mxu0 0
  %13473 = vmatprep.subr.bf16.mxu0 0
  %13474 = vmatpush2.bf16.msra.mxu0 0
  %13475 = vmatprep.subr.bf16.mxu0 0
  %13476 = vmatpush2.bf16.msra.mxu0 0
  %13477 = vmatprep.subr.bf16.mxu0 0
  %13478 = vmatpush2.bf16.msra.mxu0 0
  %13479 = vmatprep.subr.bf16.mxu0 0
  %13480 = vmatpush2.bf16.msra.mxu0 0
  %13481 = vmatprep.subr.bf16.mxu0 0
  %13482 = vmatpush2.bf16.msra.mxu0 0
  %13483 = vmatprep.subr.bf16.mxu0 0
  %13484 = vmatpush2.bf16.msra.mxu0 0
  %13485 = vmatprep.subr.bf16.mxu0 0
  %13486 = vmatpush2.bf16.msra.mxu0 0
  %13487 = vmatprep.mubr.bf16.mxu0 0
  %13488 = vmatmul.mubr.bf16.gmra.mxu0 %v13453
  %v13489 = vpop.f32.mrf.mxu0
  %v13490 = vadd.f32 0.0, %v13489
  %v13491 = vpop.f32.mrf.mxu0
  %v13492 = vpop.f32.mrf.mxu0
  %v13493 = vadd.f32 0.0, %v13492
  %v13494 = vpop.f32.mrf.mxu0
  %13495 = vdwg.mxu0
  %v13496 = vadd.f32 %v13441, %v13490
  %v13497 = vadd.f32 %v13442, %v13493
  %s13498 = scalar_lea.vmem %s2, 304
  %v13499 = vld [vmem:[%s13498] sm:$0xf]
  %v13500 = vld [vmem:[%s13498 + $0x4] sm:$0xf]
  %v13503 = vunpack.c.l.b16 %v13499
  %v13504 = vunpack.c.l.b16 %v13500
  %v13505 = vpack.c.b16 %v13504, %v13503
  %v13508 = vsel %vm11423, %v11401, 0
  %13510 = vmatprep.subr.bf16.mxu0 0
  %13511 = vmatpush1.bf16.msra.mxu0 0
  %13512 = vmatprep.subr.bf16.mxu0 0
  %13513 = vmatpush1.bf16.msra.mxu0 0
  %13514 = vmatprep.subr.bf16.mxu0 0
  %13515 = vmatpush1.bf16.msra.mxu0 0
  %13516 = vmatprep.subr.bf16.mxu0 0
  %13517 = vmatpush1.bf16.msra.mxu0 0
  %13518 = vmatprep.subr.bf16.mxu0 0
  %13519 = vmatpush1.bf16.msra.mxu0 0
  %13520 = vmatprep.subr.bf16.mxu0 0
  %13521 = vmatpush1.bf16.msra.mxu0 0
  %13522 = vmatprep.subr.bf16.mxu0 0
  %13523 = vmatpush1.bf16.msra.mxu0 0
  %13524 = vmatprep.subr.bf16.mxu0 0
  %13525 = vmatpush1.bf16.msra.mxu0 %v13505
  %13526 = vmatprep.subr.bf16.mxu0 0
  %13527 = vmatpush2.bf16.msra.mxu0 0
  %13528 = vmatprep.subr.bf16.mxu0 0
  %13529 = vmatpush2.bf16.msra.mxu0 0
  %13530 = vmatprep.subr.bf16.mxu0 0
  %13531 = vmatpush2.bf16.msra.mxu0 0
  %13532 = vmatprep.subr.bf16.mxu0 0
  %13533 = vmatpush2.bf16.msra.mxu0 0
  %13534 = vmatprep.subr.bf16.mxu0 0
  %13535 = vmatpush2.bf16.msra.mxu0 0
  %13536 = vmatprep.subr.bf16.mxu0 0
  %13537 = vmatpush2.bf16.msra.mxu0 0
  %13538 = vmatprep.subr.bf16.mxu0 0
  %13539 = vmatpush2.bf16.msra.mxu0 0
  %13540 = vmatprep.subr.bf16.mxu0 0
  %13541 = vmatpush2.bf16.msra.mxu0 0
  %13542 = vmatprep.mubr.bf16.mxu0 0
  %13543 = vmatmul.mubr.bf16.gmra.mxu0 %v13508
  %v13544 = vpop.f32.mrf.mxu0
  %v13545 = vadd.f32 0.0, %v13544
  %v13546 = vpop.f32.mrf.mxu0
  %v13547 = vpop.f32.mrf.mxu0
  %v13548 = vadd.f32 0.0, %v13547
  %v13549 = vpop.f32.mrf.mxu0
  %13550 = vdwg.mxu0
  %v13551 = vadd.f32 %v13496, %v13545
  %v13552 = vadd.f32 %v13497, %v13548
  %s13553 = scalar_lea.vmem %s2, 312
  %v13554 = vld [vmem:[%s13553] sm:$0xf]
  %v13555 = vld [vmem:[%s13553 + $0x4] sm:$0xf]
  %v13558 = vunpack.c.l.b16 %v13554
  %v13559 = vunpack.c.l.b16 %v13555
  %v13560 = vpack.c.b16 %v13559, %v13558
  %v13563 = vsel %vm11423, %v11402, 0
  %13565 = vmatprep.subr.bf16.mxu0 0
  %13566 = vmatpush1.bf16.msra.mxu0 0
  %13567 = vmatprep.subr.bf16.mxu0 0
  %13568 = vmatpush1.bf16.msra.mxu0 0
  %13569 = vmatprep.subr.bf16.mxu0 0
  %13570 = vmatpush1.bf16.msra.mxu0 0
  %13571 = vmatprep.subr.bf16.mxu0 0
  %13572 = vmatpush1.bf16.msra.mxu0 0
  %13573 = vmatprep.subr.bf16.mxu0 0
  %13574 = vmatpush1.bf16.msra.mxu0 0
  %13575 = vmatprep.subr.bf16.mxu0 0
  %13576 = vmatpush1.bf16.msra.mxu0 0
  %13577 = vmatprep.subr.bf16.mxu0 0
  %13578 = vmatpush1.bf16.msra.mxu0 0
  %13579 = vmatprep.subr.bf16.mxu0 0
  %13580 = vmatpush1.bf16.msra.mxu0 %v13560
  %13581 = vmatprep.subr.bf16.mxu0 0
  %13582 = vmatpush2.bf16.msra.mxu0 0
  %13583 = vmatprep.subr.bf16.mxu0 0
  %13584 = vmatpush2.bf16.msra.mxu0 0
  %13585 = vmatprep.subr.bf16.mxu0 0
  %13586 = vmatpush2.bf16.msra.mxu0 0
  %13587 = vmatprep.subr.bf16.mxu0 0
  %13588 = vmatpush2.bf16.msra.mxu0 0
  %13589 = vmatprep.subr.bf16.mxu0 0
  %13590 = vmatpush2.bf16.msra.mxu0 0
  %13591 = vmatprep.subr.bf16.mxu0 0
  %13592 = vmatpush2.bf16.msra.mxu0 0
  %13593 = vmatprep.subr.bf16.mxu0 0
  %13594 = vmatpush2.bf16.msra.mxu0 0
  %13595 = vmatprep.subr.bf16.mxu0 0
  %13596 = vmatpush2.bf16.msra.mxu0 0
  %13597 = vmatprep.mubr.bf16.mxu0 0
  %13598 = vmatmul.mubr.bf16.gmra.mxu0 %v13563
  %v13599 = vpop.f32.mrf.mxu0
  %v13600 = vadd.f32 0.0, %v13599
  %v13601 = vpop.f32.mrf.mxu0
  %v13602 = vpop.f32.mrf.mxu0
  %v13603 = vadd.f32 0.0, %v13602
  %v13604 = vpop.f32.mrf.mxu0
  %13605 = vdwg.mxu0
  %v13606 = vadd.f32 %v13551, %v13600
  %v13607 = vadd.f32 %v13552, %v13603
  %s13608 = scalar_lea.vmem %s2, 320
  %v13609 = vld [vmem:[%s13608] sm:$0xf]
  %v13610 = vld [vmem:[%s13608 + $0x4] sm:$0xf]
  %v13613 = vunpack.c.l.b16 %v13609
  %v13614 = vunpack.c.l.b16 %v13610
  %v13615 = vpack.c.b16 %v13614, %v13613
  %v13618 = vsel %vm11423, %v11403, 0
  %13620 = vmatprep.subr.bf16.mxu0 0
  %13621 = vmatpush1.bf16.msra.mxu0 0
  %13622 = vmatprep.subr.bf16.mxu0 0
  %13623 = vmatpush1.bf16.msra.mxu0 0
  %13624 = vmatprep.subr.bf16.mxu0 0
  %13625 = vmatpush1.bf16.msra.mxu0 0
  %13626 = vmatprep.subr.bf16.mxu0 0
  %13627 = vmatpush1.bf16.msra.mxu0 0
  %13628 = vmatprep.subr.bf16.mxu0 0
  %13629 = vmatpush1.bf16.msra.mxu0 0
  %13630 = vmatprep.subr.bf16.mxu0 0
  %13631 = vmatpush1.bf16.msra.mxu0 0
  %13632 = vmatprep.subr.bf16.mxu0 0
  %13633 = vmatpush1.bf16.msra.mxu0 0
  %13634 = vmatprep.subr.bf16.mxu0 0
  %13635 = vmatpush1.bf16.msra.mxu0 %v13615
  %13636 = vmatprep.subr.bf16.mxu0 0
  %13637 = vmatpush2.bf16.msra.mxu0 0
  %13638 = vmatprep.subr.bf16.mxu0 0
  %13639 = vmatpush2.bf16.msra.mxu0 0
  %13640 = vmatprep.subr.bf16.mxu0 0
  %13641 = vmatpush2.bf16.msra.mxu0 0
  %13642 = vmatprep.subr.bf16.mxu0 0
  %13643 = vmatpush2.bf16.msra.mxu0 0
  %13644 = vmatprep.subr.bf16.mxu0 0
  %13645 = vmatpush2.bf16.msra.mxu0 0
  %13646 = vmatprep.subr.bf16.mxu0 0
  %13647 = vmatpush2.bf16.msra.mxu0 0
  %13648 = vmatprep.subr.bf16.mxu0 0
  %13649 = vmatpush2.bf16.msra.mxu0 0
  %13650 = vmatprep.subr.bf16.mxu0 0
  %13651 = vmatpush2.bf16.msra.mxu0 0
  %13652 = vmatprep.mubr.bf16.mxu0 0
  %13653 = vmatmul.mubr.bf16.gmra.mxu0 %v13618
  %v13654 = vpop.f32.mrf.mxu0
  %v13655 = vadd.f32 0.0, %v13654
  %v13656 = vpop.f32.mrf.mxu0
  %v13657 = vpop.f32.mrf.mxu0
  %v13658 = vadd.f32 0.0, %v13657
  %v13659 = vpop.f32.mrf.mxu0
  %13660 = vdwg.mxu0
  %v13661 = vadd.f32 %v13606, %v13655
  %v13662 = vadd.f32 %v13607, %v13658
  %s13663 = scalar_lea.vmem %s2, 328
  %v13664 = vld [vmem:[%s13663] sm:$0xf]
  %v13665 = vld [vmem:[%s13663 + $0x4] sm:$0xf]
  %v13668 = vunpack.c.l.b16 %v13664
  %v13669 = vunpack.c.l.b16 %v13665
  %v13670 = vpack.c.b16 %v13669, %v13668
  %v13673 = vsel %vm11423, %v11404, 0
  %13675 = vmatprep.subr.bf16.mxu0 0
  %13676 = vmatpush1.bf16.msra.mxu0 0
  %13677 = vmatprep.subr.bf16.mxu0 0
  %13678 = vmatpush1.bf16.msra.mxu0 0
  %13679 = vmatprep.subr.bf16.mxu0 0
  %13680 = vmatpush1.bf16.msra.mxu0 0
  %13681 = vmatprep.subr.bf16.mxu0 0
  %13682 = vmatpush1.bf16.msra.mxu0 0
  %13683 = vmatprep.subr.bf16.mxu0 0
  %13684 = vmatpush1.bf16.msra.mxu0 0
  %13685 = vmatprep.subr.bf16.mxu0 0
  %13686 = vmatpush1.bf16.msra.mxu0 0
  %13687 = vmatprep.subr.bf16.mxu0 0
  %13688 = vmatpush1.bf16.msra.mxu0 0
  %13689 = vmatprep.subr.bf16.mxu0 0
  %13690 = vmatpush1.bf16.msra.mxu0 %v13670
  %13691 = vmatprep.subr.bf16.mxu0 0
  %13692 = vmatpush2.bf16.msra.mxu0 0
  %13693 = vmatprep.subr.bf16.mxu0 0
  %13694 = vmatpush2.bf16.msra.mxu0 0
  %13695 = vmatprep.subr.bf16.mxu0 0
  %13696 = vmatpush2.bf16.msra.mxu0 0
  %13697 = vmatprep.subr.bf16.mxu0 0
  %13698 = vmatpush2.bf16.msra.mxu0 0
  %13699 = vmatprep.subr.bf16.mxu0 0
  %13700 = vmatpush2.bf16.msra.mxu0 0
  %13701 = vmatprep.subr.bf16.mxu0 0
  %13702 = vmatpush2.bf16.msra.mxu0 0
  %13703 = vmatprep.subr.bf16.mxu0 0
  %13704 = vmatpush2.bf16.msra.mxu0 0
  %13705 = vmatprep.subr.bf16.mxu0 0
  %13706 = vmatpush2.bf16.msra.mxu0 0
  %13707 = vmatprep.mubr.bf16.mxu0 0
  %13708 = vmatmul.mubr.bf16.gmra.mxu0 %v13673
  %v13709 = vpop.f32.mrf.mxu0
  %v13710 = vadd.f32 0.0, %v13709
  %v13711 = vpop.f32.mrf.mxu0
  %v13712 = vpop.f32.mrf.mxu0
  %v13713 = vadd.f32 0.0, %v13712
  %v13714 = vpop.f32.mrf.mxu0
  %13715 = vdwg.mxu0
  %v13716 = vadd.f32 %v13661, %v13710
  %v13717 = vadd.f32 %v13662, %v13713
  %s13718 = scalar_lea.vmem %s2, 336
  %v13719 = vld [vmem:[%s13718] sm:$0xf]
  %v13720 = vld [vmem:[%s13718 + $0x4] sm:$0xf]
  %v13723 = vunpack.c.l.b16 %v13719
  %v13724 = vunpack.c.l.b16 %v13720
  %v13725 = vpack.c.b16 %v13724, %v13723
  %v13728 = vsel %vm11423, %v11405, 0
  %13730 = vmatprep.subr.bf16.mxu0 0
  %13731 = vmatpush1.bf16.msra.mxu0 0
  %13732 = vmatprep.subr.bf16.mxu0 0
  %13733 = vmatpush1.bf16.msra.mxu0 0
  %13734 = vmatprep.subr.bf16.mxu0 0
  %13735 = vmatpush1.bf16.msra.mxu0 0
  %13736 = vmatprep.subr.bf16.mxu0 0
  %13737 = vmatpush1.bf16.msra.mxu0 0
  %13738 = vmatprep.subr.bf16.mxu0 0
  %13739 = vmatpush1.bf16.msra.mxu0 0
  %13740 = vmatprep.subr.bf16.mxu0 0
  %13741 = vmatpush1.bf16.msra.mxu0 0
  %13742 = vmatprep.subr.bf16.mxu0 0
  %13743 = vmatpush1.bf16.msra.mxu0 0
  %13744 = vmatprep.subr.bf16.mxu0 0
  %13745 = vmatpush1.bf16.msra.mxu0 %v13725
  %13746 = vmatprep.subr.bf16.mxu0 0
  %13747 = vmatpush2.bf16.msra.mxu0 0
  %13748 = vmatprep.subr.bf16.mxu0 0
  %13749 = vmatpush2.bf16.msra.mxu0 0
  %13750 = vmatprep.subr.bf16.mxu0 0
  %13751 = vmatpush2.bf16.msra.mxu0 0
  %13752 = vmatprep.subr.bf16.mxu0 0
  %13753 = vmatpush2.bf16.msra.mxu0 0
  %13754 = vmatprep.subr.bf16.mxu0 0
  %13755 = vmatpush2.bf16.msra.mxu0 0
  %13756 = vmatprep.subr.bf16.mxu0 0
  %13757 = vmatpush2.bf16.msra.mxu0 0
  %13758 = vmatprep.subr.bf16.mxu0 0
  %13759 = vmatpush2.bf16.msra.mxu0 0
  %13760 = vmatprep.subr.bf16.mxu0 0
  %13761 = vmatpush2.bf16.msra.mxu0 0
  %13762 = vmatprep.mubr.bf16.mxu0 0
  %13763 = vmatmul.mubr.bf16.gmra.mxu0 %v13728
  %v13764 = vpop.f32.mrf.mxu0
  %v13765 = vadd.f32 0.0, %v13764
  %v13766 = vpop.f32.mrf.mxu0
  %v13767 = vpop.f32.mrf.mxu0
  %v13768 = vadd.f32 0.0, %v13767
  %v13769 = vpop.f32.mrf.mxu0
  %13770 = vdwg.mxu0
  %v13771 = vadd.f32 %v13716, %v13765
  %v13772 = vadd.f32 %v13717, %v13768
  %s13773 = scalar_lea.vmem %s2, 344
  %v13774 = vld [vmem:[%s13773] sm:$0xf]
  %v13775 = vld [vmem:[%s13773 + $0x4] sm:$0xf]
  %v13778 = vunpack.c.l.b16 %v13774
  %v13779 = vunpack.c.l.b16 %v13775
  %v13780 = vpack.c.b16 %v13779, %v13778
  %v13783 = vsel %vm11423, %v11406, 0
  %13785 = vmatprep.subr.bf16.mxu0 0
  %13786 = vmatpush1.bf16.msra.mxu0 0
  %13787 = vmatprep.subr.bf16.mxu0 0
  %13788 = vmatpush1.bf16.msra.mxu0 0
  %13789 = vmatprep.subr.bf16.mxu0 0
  %13790 = vmatpush1.bf16.msra.mxu0 0
  %13791 = vmatprep.subr.bf16.mxu0 0
  %13792 = vmatpush1.bf16.msra.mxu0 0
  %13793 = vmatprep.subr.bf16.mxu0 0
  %13794 = vmatpush1.bf16.msra.mxu0 0
  %13795 = vmatprep.subr.bf16.mxu0 0
  %13796 = vmatpush1.bf16.msra.mxu0 0
  %13797 = vmatprep.subr.bf16.mxu0 0
  %13798 = vmatpush1.bf16.msra.mxu0 0
  %13799 = vmatprep.subr.bf16.mxu0 0
  %13800 = vmatpush1.bf16.msra.mxu0 %v13780
  %13801 = vmatprep.subr.bf16.mxu0 0
  %13802 = vmatpush2.bf16.msra.mxu0 0
  %13803 = vmatprep.subr.bf16.mxu0 0
  %13804 = vmatpush2.bf16.msra.mxu0 0
  %13805 = vmatprep.subr.bf16.mxu0 0
  %13806 = vmatpush2.bf16.msra.mxu0 0
  %13807 = vmatprep.subr.bf16.mxu0 0
  %13808 = vmatpush2.bf16.msra.mxu0 0
  %13809 = vmatprep.subr.bf16.mxu0 0
  %13810 = vmatpush2.bf16.msra.mxu0 0
  %13811 = vmatprep.subr.bf16.mxu0 0
  %13812 = vmatpush2.bf16.msra.mxu0 0
  %13813 = vmatprep.subr.bf16.mxu0 0
  %13814 = vmatpush2.bf16.msra.mxu0 0
  %13815 = vmatprep.subr.bf16.mxu0 0
  %13816 = vmatpush2.bf16.msra.mxu0 0
  %13817 = vmatprep.mubr.bf16.mxu0 0
  %13818 = vmatmul.mubr.bf16.gmra.mxu0 %v13783
  %v13819 = vpop.f32.mrf.mxu0
  %v13820 = vadd.f32 0.0, %v13819
  %v13821 = vpop.f32.mrf.mxu0
  %v13822 = vpop.f32.mrf.mxu0
  %v13823 = vadd.f32 0.0, %v13822
  %v13824 = vpop.f32.mrf.mxu0
  %13825 = vdwg.mxu0
  %v13826 = vadd.f32 %v13771, %v13820
  %v13827 = vadd.f32 %v13772, %v13823
  %s13828 = scalar_lea.vmem %s2, 352
  %v13829 = vld [vmem:[%s13828] sm:$0xf]
  %v13830 = vld [vmem:[%s13828 + $0x4] sm:$0xf]
  %v13833 = vunpack.c.l.b16 %v13829
  %v13834 = vunpack.c.l.b16 %v13830
  %v13835 = vpack.c.b16 %v13834, %v13833
  %v13838 = vsel %vm11423, %v11407, 0
  %13840 = vmatprep.subr.bf16.mxu0 0
  %13841 = vmatpush1.bf16.msra.mxu0 0
  %13842 = vmatprep.subr.bf16.mxu0 0
  %13843 = vmatpush1.bf16.msra.mxu0 0
  %13844 = vmatprep.subr.bf16.mxu0 0
  %13845 = vmatpush1.bf16.msra.mxu0 0
  %13846 = vmatprep.subr.bf16.mxu0 0
  %13847 = vmatpush1.bf16.msra.mxu0 0
  %13848 = vmatprep.subr.bf16.mxu0 0
  %13849 = vmatpush1.bf16.msra.mxu0 0
  %13850 = vmatprep.subr.bf16.mxu0 0
  %13851 = vmatpush1.bf16.msra.mxu0 0
  %13852 = vmatprep.subr.bf16.mxu0 0
  %13853 = vmatpush1.bf16.msra.mxu0 0
  %13854 = vmatprep.subr.bf16.mxu0 0
  %13855 = vmatpush1.bf16.msra.mxu0 %v13835
  %13856 = vmatprep.subr.bf16.mxu0 0
  %13857 = vmatpush2.bf16.msra.mxu0 0
  %13858 = vmatprep.subr.bf16.mxu0 0
  %13859 = vmatpush2.bf16.msra.mxu0 0
  %13860 = vmatprep.subr.bf16.mxu0 0
  %13861 = vmatpush2.bf16.msra.mxu0 0
  %13862 = vmatprep.subr.bf16.mxu0 0
  %13863 = vmatpush2.bf16.msra.mxu0 0
  %13864 = vmatprep.subr.bf16.mxu0 0
  %13865 = vmatpush2.bf16.msra.mxu0 0
  %13866 = vmatprep.subr.bf16.mxu0 0
  %13867 = vmatpush2.bf16.msra.mxu0 0
  %13868 = vmatprep.subr.bf16.mxu0 0
  %13869 = vmatpush2.bf16.msra.mxu0 0
  %13870 = vmatprep.subr.bf16.mxu0 0
  %13871 = vmatpush2.bf16.msra.mxu0 0
  %13872 = vmatprep.mubr.bf16.mxu0 0
  %13873 = vmatmul.mubr.bf16.gmra.mxu0 %v13838
  %v13874 = vpop.f32.mrf.mxu0
  %v13875 = vadd.f32 0.0, %v13874
  %v13876 = vpop.f32.mrf.mxu0
  %v13877 = vpop.f32.mrf.mxu0
  %v13878 = vadd.f32 0.0, %v13877
  %v13879 = vpop.f32.mrf.mxu0
  %13880 = vdwg.mxu0
  %v13881 = vadd.f32 %v13826, %v13875
  %v13882 = vadd.f32 %v13827, %v13878
  %s13883 = scalar_lea.vmem %s2, 360
  %v13884 = vld [vmem:[%s13883] sm:$0xf]
  %v13885 = vld [vmem:[%s13883 + $0x4] sm:$0xf]
  %v13888 = vunpack.c.l.b16 %v13884
  %v13889 = vunpack.c.l.b16 %v13885
  %v13890 = vpack.c.b16 %v13889, %v13888
  %v13893 = vsel %vm11423, %v11408, 0
  %13895 = vmatprep.subr.bf16.mxu0 0
  %13896 = vmatpush1.bf16.msra.mxu0 0
  %13897 = vmatprep.subr.bf16.mxu0 0
  %13898 = vmatpush1.bf16.msra.mxu0 0
  %13899 = vmatprep.subr.bf16.mxu0 0
  %13900 = vmatpush1.bf16.msra.mxu0 0
  %13901 = vmatprep.subr.bf16.mxu0 0
  %13902 = vmatpush1.bf16.msra.mxu0 0
  %13903 = vmatprep.subr.bf16.mxu0 0
  %13904 = vmatpush1.bf16.msra.mxu0 0
  %13905 = vmatprep.subr.bf16.mxu0 0
  %13906 = vmatpush1.bf16.msra.mxu0 0
  %13907 = vmatprep.subr.bf16.mxu0 0
  %13908 = vmatpush1.bf16.msra.mxu0 0
  %13909 = vmatprep.subr.bf16.mxu0 0
  %13910 = vmatpush1.bf16.msra.mxu0 %v13890
  %13911 = vmatprep.subr.bf16.mxu0 0
  %13912 = vmatpush2.bf16.msra.mxu0 0
  %13913 = vmatprep.subr.bf16.mxu0 0
  %13914 = vmatpush2.bf16.msra.mxu0 0
  %13915 = vmatprep.subr.bf16.mxu0 0
  %13916 = vmatpush2.bf16.msra.mxu0 0
  %13917 = vmatprep.subr.bf16.mxu0 0
  %13918 = vmatpush2.bf16.msra.mxu0 0
  %13919 = vmatprep.subr.bf16.mxu0 0
  %13920 = vmatpush2.bf16.msra.mxu0 0
  %13921 = vmatprep.subr.bf16.mxu0 0
  %13922 = vmatpush2.bf16.msra.mxu0 0
  %13923 = vmatprep.subr.bf16.mxu0 0
  %13924 = vmatpush2.bf16.msra.mxu0 0
  %13925 = vmatprep.subr.bf16.mxu0 0
  %13926 = vmatpush2.bf16.msra.mxu0 0
  %13927 = vmatprep.mubr.bf16.mxu0 0
  %13928 = vmatmul.mubr.bf16.gmra.mxu0 %v13893
  %v13929 = vpop.f32.mrf.mxu0
  %v13930 = vadd.f32 0.0, %v13929
  %v13931 = vpop.f32.mrf.mxu0
  %v13932 = vpop.f32.mrf.mxu0
  %v13933 = vadd.f32 0.0, %v13932
  %v13934 = vpop.f32.mrf.mxu0
  %13935 = vdwg.mxu0
  %v13936 = vadd.f32 %v13881, %v13930
  %v13937 = vadd.f32 %v13882, %v13933
  %s13938 = scalar_lea.vmem %s2, 368
  %v13939 = vld [vmem:[%s13938] sm:$0xf]
  %v13940 = vld [vmem:[%s13938 + $0x4] sm:$0xf]
  %v13943 = vunpack.c.l.b16 %v13939
  %v13944 = vunpack.c.l.b16 %v13940
  %v13945 = vpack.c.b16 %v13944, %v13943
  %v13948 = vsel %vm11423, %v11409, 0
  %13950 = vmatprep.subr.bf16.mxu0 0
  %13951 = vmatpush1.bf16.msra.mxu0 0
  %13952 = vmatprep.subr.bf16.mxu0 0
  %13953 = vmatpush1.bf16.msra.mxu0 0
  %13954 = vmatprep.subr.bf16.mxu0 0
  %13955 = vmatpush1.bf16.msra.mxu0 0
  %13956 = vmatprep.subr.bf16.mxu0 0
  %13957 = vmatpush1.bf16.msra.mxu0 0
  %13958 = vmatprep.subr.bf16.mxu0 0
  %13959 = vmatpush1.bf16.msra.mxu0 0
  %13960 = vmatprep.subr.bf16.mxu0 0
  %13961 = vmatpush1.bf16.msra.mxu0 0
  %13962 = vmatprep.subr.bf16.mxu0 0
  %13963 = vmatpush1.bf16.msra.mxu0 0
  %13964 = vmatprep.subr.bf16.mxu0 0
  %13965 = vmatpush1.bf16.msra.mxu0 %v13945
  %13966 = vmatprep.subr.bf16.mxu0 0
  %13967 = vmatpush2.bf16.msra.mxu0 0
  %13968 = vmatprep.subr.bf16.mxu0 0
  %13969 = vmatpush2.bf16.msra.mxu0 0
  %13970 = vmatprep.subr.bf16.mxu0 0
  %13971 = vmatpush2.bf16.msra.mxu0 0
  %13972 = vmatprep.subr.bf16.mxu0 0
  %13973 = vmatpush2.bf16.msra.mxu0 0
  %13974 = vmatprep.subr.bf16.mxu0 0
  %13975 = vmatpush2.bf16.msra.mxu0 0
  %13976 = vmatprep.subr.bf16.mxu0 0
  %13977 = vmatpush2.bf16.msra.mxu0 0
  %13978 = vmatprep.subr.bf16.mxu0 0
  %13979 = vmatpush2.bf16.msra.mxu0 0
  %13980 = vmatprep.subr.bf16.mxu0 0
  %13981 = vmatpush2.bf16.msra.mxu0 0
  %13982 = vmatprep.mubr.bf16.mxu0 0
  %13983 = vmatmul.mubr.bf16.gmra.mxu0 %v13948
  %v13984 = vpop.f32.mrf.mxu0
  %v13985 = vadd.f32 0.0, %v13984
  %v13986 = vpop.f32.mrf.mxu0
  %v13987 = vpop.f32.mrf.mxu0
  %v13988 = vadd.f32 0.0, %v13987
  %v13989 = vpop.f32.mrf.mxu0
  %13990 = vdwg.mxu0
  %v13991 = vadd.f32 %v13936, %v13985
  %v13992 = vadd.f32 %v13937, %v13988
  %s13993 = scalar_lea.vmem %s2, 376
  %v13994 = vld [vmem:[%s13993] sm:$0xf]
  %v13995 = vld [vmem:[%s13993 + $0x4] sm:$0xf]
  %v13998 = vunpack.c.l.b16 %v13994
  %v13999 = vunpack.c.l.b16 %v13995
  %v14000 = vpack.c.b16 %v13999, %v13998
  %v14003 = vsel %vm11423, %v11410, 0
  %14005 = vmatprep.subr.bf16.mxu0 0
  %14006 = vmatpush1.bf16.msra.mxu0 0
  %14007 = vmatprep.subr.bf16.mxu0 0
  %14008 = vmatpush1.bf16.msra.mxu0 0
  %14009 = vmatprep.subr.bf16.mxu0 0
  %14010 = vmatpush1.bf16.msra.mxu0 0
  %14011 = vmatprep.subr.bf16.mxu0 0
  %14012 = vmatpush1.bf16.msra.mxu0 0
  %14013 = vmatprep.subr.bf16.mxu0 0
  %14014 = vmatpush1.bf16.msra.mxu0 0
  %14015 = vmatprep.subr.bf16.mxu0 0
  %14016 = vmatpush1.bf16.msra.mxu0 0
  %14017 = vmatprep.subr.bf16.mxu0 0
  %14018 = vmatpush1.bf16.msra.mxu0 0
  %14019 = vmatprep.subr.bf16.mxu0 0
  %14020 = vmatpush1.bf16.msra.mxu0 %v14000
  %14021 = vmatprep.subr.bf16.mxu0 0
  %14022 = vmatpush2.bf16.msra.mxu0 0
  %14023 = vmatprep.subr.bf16.mxu0 0
  %14024 = vmatpush2.bf16.msra.mxu0 0
  %14025 = vmatprep.subr.bf16.mxu0 0
  %14026 = vmatpush2.bf16.msra.mxu0 0
  %14027 = vmatprep.subr.bf16.mxu0 0
  %14028 = vmatpush2.bf16.msra.mxu0 0
  %14029 = vmatprep.subr.bf16.mxu0 0
  %14030 = vmatpush2.bf16.msra.mxu0 0
  %14031 = vmatprep.subr.bf16.mxu0 0
  %14032 = vmatpush2.bf16.msra.mxu0 0
  %14033 = vmatprep.subr.bf16.mxu0 0
  %14034 = vmatpush2.bf16.msra.mxu0 0
  %14035 = vmatprep.subr.bf16.mxu0 0
  %14036 = vmatpush2.bf16.msra.mxu0 0
  %14037 = vmatprep.mubr.bf16.mxu0 0
  %14038 = vmatmul.mubr.bf16.gmra.mxu0 %v14003
  %v14039 = vpop.f32.mrf.mxu0
  %v14040 = vadd.f32 0.0, %v14039
  %v14041 = vpop.f32.mrf.mxu0
  %v14042 = vpop.f32.mrf.mxu0
  %v14043 = vadd.f32 0.0, %v14042
  %v14044 = vpop.f32.mrf.mxu0
  %14045 = vdwg.mxu0
  %v14046 = vadd.f32 %v13991, %v14040
  %v14047 = vadd.f32 %v13992, %v14043
  %s14048 = scalar_lea.vmem %s2, 384
  %v14049 = vld [vmem:[%s14048] sm:$0xf]
  %v14050 = vld [vmem:[%s14048 + $0x4] sm:$0xf]
  %v14053 = vunpack.c.l.b16 %v14049
  %v14054 = vunpack.c.l.b16 %v14050
  %v14055 = vpack.c.b16 %v14054, %v14053
  %v14058 = vsel %vm11423, %v11411, 0
  %14060 = vmatprep.subr.bf16.mxu0 0
  %14061 = vmatpush1.bf16.msra.mxu0 0
  %14062 = vmatprep.subr.bf16.mxu0 0
  %14063 = vmatpush1.bf16.msra.mxu0 0
  %14064 = vmatprep.subr.bf16.mxu0 0
  %14065 = vmatpush1.bf16.msra.mxu0 0
  %14066 = vmatprep.subr.bf16.mxu0 0
  %14067 = vmatpush1.bf16.msra.mxu0 0
  %14068 = vmatprep.subr.bf16.mxu0 0
  %14069 = vmatpush1.bf16.msra.mxu0 0
  %14070 = vmatprep.subr.bf16.mxu0 0
  %14071 = vmatpush1.bf16.msra.mxu0 0
  %14072 = vmatprep.subr.bf16.mxu0 0
  %14073 = vmatpush1.bf16.msra.mxu0 0
  %14074 = vmatprep.subr.bf16.mxu0 0
  %14075 = vmatpush1.bf16.msra.mxu0 %v14055
  %14076 = vmatprep.subr.bf16.mxu0 0
  %14077 = vmatpush2.bf16.msra.mxu0 0
  %14078 = vmatprep.subr.bf16.mxu0 0
  %14079 = vmatpush2.bf16.msra.mxu0 0
  %14080 = vmatprep.subr.bf16.mxu0 0
  %14081 = vmatpush2.bf16.msra.mxu0 0
  %14082 = vmatprep.subr.bf16.mxu0 0
  %14083 = vmatpush2.bf16.msra.mxu0 0
  %14084 = vmatprep.subr.bf16.mxu0 0
  %14085 = vmatpush2.bf16.msra.mxu0 0
  %14086 = vmatprep.subr.bf16.mxu0 0
  %14087 = vmatpush2.bf16.msra.mxu0 0
  %14088 = vmatprep.subr.bf16.mxu0 0
  %14089 = vmatpush2.bf16.msra.mxu0 0
  %14090 = vmatprep.subr.bf16.mxu0 0
  %14091 = vmatpush2.bf16.msra.mxu0 0
  %14092 = vmatprep.mubr.bf16.mxu0 0
  %14093 = vmatmul.mubr.bf16.gmra.mxu0 %v14058
  %v14094 = vpop.f32.mrf.mxu0
  %v14095 = vadd.f32 0.0, %v14094
  %v14096 = vpop.f32.mrf.mxu0
  %v14097 = vpop.f32.mrf.mxu0
  %v14098 = vadd.f32 0.0, %v14097
  %v14099 = vpop.f32.mrf.mxu0
  %14100 = vdwg.mxu0
  %v14101 = vadd.f32 %v14046, %v14095
  %v14102 = vadd.f32 %v14047, %v14098
  %v14103 = vmax.f32 %v14101, 0.0
  %v14104 = vmax.f32 %v14102, 0.0
  %v14105 = vld [vmem:[%s3] sm:$0xff]
  %vm14106 = vcmask 64512
  %v14108 = vsel %vm14106, %v14103, 0
  %v14111 = vsel %vm14106, %v14104, 0
  %14113 = vmatprep.subr.mxu0 0.0
  %14114 = vmatpush1.msra.mxu0 0.0
  %14115 = vmatprep.subr.mxu0 0.0
  %14116 = vmatpush1.msra.mxu0 0.0
  %14117 = vmatprep.subr.mxu0 0.0
  %14118 = vmatpush1.msra.mxu0 0.0
  %14119 = vmatprep.subr.mxu0 0.0
  %14120 = vmatpush1.msra.mxu0 0.0
  %14121 = vmatprep.subr.mxu0 0.0
  %14122 = vmatpush1.msra.mxu0 0.0
  %14123 = vmatprep.subr.mxu0 0.0
  %14124 = vmatpush1.msra.mxu0 0.0
  %14125 = vmatprep.subr.mxu0 0.0
  %14126 = vmatpush1.msra.mxu0 0.0
  %14127 = vmatprep.subr.mxu0 0.0
  %14128 = vmatpush1.msra.mxu0 0.0
  %14129 = vmatprep.subr.mxu0 0.0
  %14130 = vmatpush1.msra.mxu0 0.0
  %14131 = vmatprep.subr.mxu0 0.0
  %14132 = vmatpush1.msra.mxu0 0.0
  %14133 = vmatprep.subr.mxu0 0.0
  %14134 = vmatpush1.msra.mxu0 0.0
  %14135 = vmatprep.subr.mxu0 0.0
  %14136 = vmatpush1.msra.mxu0 0.0
  %14137 = vmatprep.subr.mxu0 0.0
  %14138 = vmatpush1.msra.mxu0 0.0
  %14139 = vmatprep.subr.mxu0 0.0
  %14140 = vmatpush1.msra.mxu0 0.0
  %14141 = vmatprep.subr.mxu0 0.0
  %14142 = vmatpush1.msra.mxu0 0.0
  %14143 = vmatprep.subr.mxu0 0.0
  %14144 = vmatpush1.msra.mxu0 %v14105
  %14145 = vmatprep.subr.mxu0 0.0
  %14146 = vmatpush2.msra.mxu0 0.0
  %14147 = vmatprep.subr.mxu0 0.0
  %14148 = vmatpush2.msra.mxu0 0.0
  %14149 = vmatprep.subr.mxu0 0.0
  %14150 = vmatpush2.msra.mxu0 0.0
  %14151 = vmatprep.subr.mxu0 0.0
  %14152 = vmatpush2.msra.mxu0 0.0
  %14153 = vmatprep.subr.mxu0 0.0
  %14154 = vmatpush2.msra.mxu0 0.0
  %14155 = vmatprep.subr.mxu0 0.0
  %14156 = vmatpush2.msra.mxu0 0.0
  %14157 = vmatprep.subr.mxu0 0.0
  %14158 = vmatpush2.msra.mxu0 0.0
  %14159 = vmatprep.subr.mxu0 0.0
  %14160 = vmatpush2.msra.mxu0 0.0
  %14161 = vmatprep.subr.mxu0 0.0
  %14162 = vmatpush2.msra.mxu0 0.0
  %14163 = vmatprep.subr.mxu0 0.0
  %14164 = vmatpush2.msra.mxu0 0.0
  %14165 = vmatprep.subr.mxu0 0.0
  %14166 = vmatpush2.msra.mxu0 0.0
  %14167 = vmatprep.subr.mxu0 0.0
  %14168 = vmatpush2.msra.mxu0 0.0
  %14169 = vmatprep.subr.mxu0 0.0
  %14170 = vmatpush2.msra.mxu0 0.0
  %14171 = vmatprep.subr.mxu0 0.0
  %14172 = vmatpush2.msra.mxu0 0.0
  %14173 = vmatprep.subr.mxu0 0.0
  %14174 = vmatpush2.msra.mxu0 0.0
  %14175 = vmatprep.subr.mxu0 0.0
  %14176 = vmatpush2.msra.mxu0 0.0
  %14177 = vmatprep.mubr.f32.mxu0 0.0
  %14178 = vmatmul.mubr.f32.gmra.mxu0 %v14108
  %v14179 = vpop.f32.mrf.mxu0
  %v14180 = vadd.f32 0.0, %v14179
  %v14181 = vpop.f32.mrf.mxu0
  %14182 = vmatprep.mubr.f32.mxu0 0.0
  %14183 = vmatmul.mubr.f32.gmra.mxu0 %v14111
  %v14184 = vpop.f32.mrf.mxu0
  %v14185 = vadd.f32 0.0, %v14184
  %v14186 = vpop.f32.mrf.mxu0
  %14187 = vdwg.mxu0
  %vm14188 = vcmask 15360
  %14189 = vst.msk [vmem:[%s5] sm:$0xff] %vm14188, %v14180
  %14190 = vst.msk [vmem:[%s5 + $0x8] sm:$0xff] %vm14188, %v14185
  %v14191 = vsel %vm14188, %v14180, -inf
  %14192 = vmax.xlane.f32.xlu0 %v14191
  %v14193 = vpop.xlane.xlu0 %14192
  %v14194 = vsel %vm14188, %v14185, -inf
  %14195 = vmax.xlane.f32.xlu0 %v14194
  %v14196 = vpop.xlane.xlu0 %14195
  %v14197 = vsub.f32 %v14180, %v14193
  %v14198 = vsub.f32 %v14185, %v14196
  %v14199 = vmul.f32 %v14197, 1.442695
  %v14200 = vpow.pop %v14199
  %v14201 = vmul.f32 %v14198, 1.442695
  %v14202 = vpow.pop %v14201
  %v14203 = vsel %vm14188, %v14200, 0.0
  %14204 = vadd.xlane.f32.xlu0 %v14203
  %v14205 = vpop.xlane.xlu0 %14204
  %v14206 = vsel %vm14188, %v14202, 0.0
  %14207 = vadd.xlane.f32.xlu0 %v14206
  %v14208 = vpop.xlane.xlu0 %14207
  %v14209 = vlog2.pop %v14205
  %v14210 = vmul.f32 %v14209, 0.6931472
  %v14211 = vlog2.pop %v14208
  %v14212 = vmul.f32 %v14211, 0.6931472
  %v14213 = vadd.f32 %v14193, %v14210
  %v14214 = vadd.f32 %v14196, %v14212
  %v14215 = vlaneseq
  %v14216 = vand.u32 %v14215, 127
  %v14217 = vld [vmem:[%s4] sm:$0xff]
  %v14218 = vld [vmem:[%s4 + $0x8] sm:$0xff]
  %14219 = vset.pattern.permute.xlu0 0
  %14220 = vperm.xlu0 %14219, %v14217
  %v14221 = vpop.permute.xlu0 %14220
  %14222 = vset.pattern.permute.xlu0 0
  %14223 = vperm.xlu0 %14222, %v14218
  %v14224 = vpop.permute.xlu0 %14223
  %vm14225 = vcmp.eq.s32.totalorder %v14216, %v14221
  %vm14226 = vcmp.eq.s32.totalorder %v14216, %v14224
  %v14227 = vsel %vm14225, %v14180, 0.0
  %v14228 = vsel %vm14226, %v14185, 0.0
  %v14229 = vsel %vm14188, %v14227, 0.0
  %14230 = vadd.xlane.f32.xlu0 %v14229
  %v14231 = vpop.xlane.xlu0 %14230
  %v14232 = vsel %vm14188, %v14228, 0.0
  %14233 = vadd.xlane.f32.xlu0 %v14232
  %v14234 = vpop.xlane.xlu0 %14233
  %s14235 = smul.u32 0, 16
  %v14236 = vlaneseq
  %v14237 = vshrl.u32 %v14236, 7
  %v14238 = vadd.s32 %v14237, 8
  %v14239 = vstv %s14235
  %v14240 = vadd.s32 %v14239, %v14237
  %v14241 = vadd.s32 %v14239, %v14238
  %vm14242 = vcmp.lt.s32.totalorder %v14240, 8
  %vm14243 = vcmp.lt.s32.totalorder %v14241, 8
  %v14244 = vsub.f32 %v14213, %v14231
  %v14245 = vsub.f32 %v14214, %v14234
  %v14246 = vsel %vm14242, %v14244, 0.0
  %v14247 = vsel %vm14243, %v14245, 0.0
  %vm14248 = vcmask 7168
  %14249 = vst.msk [vmem:[%s6] sm:$0xff] %vm14248, %v14246
  %14250 = vst.msk [vmem:[%s6 + $0x8] sm:$0xff] %vm14248, %v14247
  // Predicated region
  $region22: #{tpu_custom_call.1} parent=0 // pred_check
    _
  $region23: #{tpu_custom_call.1} parent=0 // pred_check_branch
    %14252 = sbr.rel (0) target = $region25
  $region24: #{tpu_custom_call.1} parent=0 // pred_region
    _
  $region25: #{tpu_custom_call.1} parent=0 // pred_fallthru
    _
  // Predicated region
  $region26: #{tpu_custom_call.1} parent=0 // pred_check
    _
  $region27: #{tpu_custom_call.1} parent=0 // pred_check_branch
    %14254 = sbr.rel (0) target = $region29
  $region28: #{tpu_custom_call.1} parent=0 // pred_region
    _
  $region29: #{tpu_custom_call.1} parent=0 // pred_fallthru
    _
  // Predicated region
  $region30: #{tpu_custom_call.1} parent=0 // pred_check
    _
  $region31: #{tpu_custom_call.1} parent=0 // pred_check_branch
    %14256 = sbr.rel (0) target = $region33
  $region32: #{tpu_custom_call.1} parent=0 // pred_region
    _
  $region33: #{tpu_custom_call.1} parent=0 // pred_fallthru
    _
  // Predicated region
  $region34: #{tpu_custom_call.1} parent=0 // pred_check
    _
  $region35: #{tpu_custom_call.1} parent=0 // pred_check_branch
    %14258 = sbr.rel (0) target = $region37
  $region36: #{tpu_custom_call.1} parent=0 // pred_region
    _
  $region37: #{tpu_custom_call.1} parent=0 // pred_fallthru
    _

</llo_original>
